<compile_context>
chip_gen: v6e
topology: v6e:2x2x1
jax: 0.10.0
libtpu: 0.0.40
codegen_flags: <defaults>
</compile_context>

<pallas_src>
import functools

import jax
import jax.numpy as jnp
import numpy as np
from jax.experimental import pallas as pl
from jax.experimental.pallas import tpu as pltpu


# ----------------------------------------------------------------------------
# Model constants (scaled-down stand-ins)
# ----------------------------------------------------------------------------
CB = 32          # stands in for 2048 (backbone output channels)
C1 = 16          # stands in for 512
C2 = 8           # stands in for 128 (DecoderAuxBlock inpdim)
NUM_CLASSES = 5  # cfg.NUM_CLASSES
ASPP_DILATIONS = (6, 12, 18, 24)
OUT_LANES = 128  # lane-dense output slab width (classes lanes 0..4, depth lane 5)

# Matmul operand dtype.  TODO(synk): flip to jnp.bfloat16 on v6e/v7x at real
# channel counts (native MXU rate, halves weight VMEM); at these toy shapes the
# kernel is not MXU-bound (review) and f32 operands keep the 1e-3 reference
# check tight.  If flipped, loosen the rel-err tolerance in __main__ to ~5e-2.
MM_DTYPE = jnp.float32


# ----------------------------------------------------------------------------
# Static ASPP dead-tap analysis (trace time, pure Python)
# ----------------------------------------------------------------------------
def _surviving_aspp_offsets(H, W, dilations):
    """A 3x3 tap at offset (dh, dw) = ((kh-1)*d, (kw-1)*d) reads a window that
    lies entirely inside the zero padding iff |dh| >= H or |dw| >= W; such taps
    contribute exactly zero and are dropped.  Taps from different branches that
    land on the same offset (e.g. the four centers) are merged (weights summed).

    Returns (offsets, groups): offsets is a sorted tuple of unique (dh, dw);
    groups[i] is the list of (branch, kh, kw) contributing to offsets[i].
    """
    groups = {}
    for b, d in enumerate(dilations):
        for kh in range(3):
            for kw in range(3):
                dh, dw = (kh - 1) * d, (kw - 1) * d
                if abs(dh) >= H or abs(dw) >= W:
                    continue
                groups.setdefault((dh, dw), []).append((b, kh, kw))
    offsets = tuple(sorted(groups))
    return offsets, [groups[o] for o in offsets]


def _shift_matrix(dh, dw, b_blk, H, W):
    """0/1 matrix S with S[r, r + dh*W + dw] = 1 iff the conv tap at spatial
    offset (dh, dw) reads inside the image for flattened row r = b*H*W + h*W + w
    (b local to the block of b_blk images).  Out-of-image taps read the implicit
    zero padding, i.e. that row of S is all zero.  (S @ A) is then the shifted +
    boundary-masked activation, computed entirely on the MXU (no sublane-offset
    slices, no masked stores).  Valid rows never cross a batch boundary."""
    HW = H * W
    M = b_blk * HW
    r = np.arange(M)
    h = (r % HW) // W
    w = r % W
    valid = (h + dh >= 0) & (h + dh < H) & (w + dw >= 0) & (w + dw < W)
    s = np.zeros((M, M), np.float32)
    rv = r[valid]
    s[rv, rv + dh * W + dw] = 1.0
    return s


# ----------------------------------------------------------------------------
# Fused Pallas kernel (one grid step = B_BLK batch elements, M = B_BLK*H*W rows)
# ----------------------------------------------------------------------------
def _dada_fused_kernel(
        xcol0_ref,                                  # (M, 27) stem im2col rows
        shift_ref,                                  # (n_off, M, M) shift+mask mats
        w_bb0_ref, b_bb0_ref,                       # (27, CB), (1, CB)
        w_bb1_ref, b_bb1_ref,                       # (9, CB, CB), (1, CB)
        w_dec1_ref, b_dec1_ref,                     # (9, CB, C1), (1, C1)
        w_dec2_ref, b_dec2_ref,                     # (9, C1, C2), (1, C2)
        w_dec4_ref, b_dec4_ref,                     # (C2, CB), (1, CB)
        w_dep_ref,                                  # (C2, 128)  depth -> lane ncls
        w_cls_ref,                                  # (ntaps, CB, 128) cls -> lanes 0..ncls-1
        b_out_ref,                                  # (1, 128)
        out_ref,                                    # (M, 128) lane-dense output slab
        *, conv3_sidx, aspp_sidx):

    def mm(a, w):
        return jnp.dot(a.astype(MM_DTYPE), w.astype(MM_DTYPE),
                       preferred_element_type=jnp.float32)

    def tap(a, si):
        # Shift + zero-pad boundary handling as a single MXU pass; si == -1
        # marks the (0, 0) offset (identity, no matmul needed).
        return a if si < 0 else mm(shift_ref[si], a)

    def conv3x3(a, w_ref, b_ref, sidx, relu):
        acc = b_ref[...]
        for t, si in enumerate(sidx):
            acc = acc + mm(tap(a, si), w_ref[t])
        return jnp.maximum(acc, 0.0) if relu else acc

    # --- backbone stem (stand-in, see TODO in wrapper) -----------------------
    xb0 = jnp.maximum(mm(xcol0_ref[...], w_bb0_ref[...]) + b_bb0_ref[...], 0.0)
    x_bb = conv3x3(xb0, w_bb1_ref, b_bb1_ref, conv3_sidx, relu=True)      # (M, CB)

    # --- DecoderAuxBlock ------------------------------------------------------
    d1 = conv3x3(x_bb, w_dec1_ref, b_dec1_ref, conv3_sidx, relu=True)     # (M, C1)
    x4_dec3 = conv3x3(d1, w_dec2_ref, b_dec2_ref, conv3_sidx, relu=True)  # (M, C2)
    x4_dec4 = mm(x4_dec3, w_dec4_ref[...]) + b_dec4_ref[...]              # (M, CB)

    # --- DADA fusion + depth head + ASPP classifier into one 128-lane slab ---
    xf = x_bb * x4_dec4                                                   # (M, CB)
    out = mm(x4_dec3, w_dep_ref[...])            # depth head -> lane NUM_CLASSES
    for t, si in enumerate(aspp_sidx):           # ASPP (dead taps pruned/merged)
        out = out + mm(tap(xf, si), w_cls_ref[t])
    out_ref[...] = out + b_out_ref[...]          # single dense (M, 128) store


# ----------------------------------------------------------------------------
# Wrapper: weight/input prep (tiny, XLA-side) + one pallas_call
# ----------------------------------------------------------------------------
@jax.jit
def dada_forward(params, x_nchw):
    x = jnp.transpose(x_nchw, (0, 2, 3, 1)).astype(jnp.float32)       # NHWC
    N, Hin, Win, cin_img = x.shape

    # --- backbone stem preprocessing (operates only on the 12 KiB image) ----
    # TODO(synk): full ResNet-101 Bottleneck [3,4,23,3] backbone is replaced by
    # a 2-conv stem with a fixed x4 spatial subsampling (channels 2048 -> CB).
    stride = 4
    H, W = Hin // stride, Win // stride
    HW = H * W
    xp = jnp.pad(x, ((0, 0), (1, 1), (1, 1), (0, 0)))                 # 'same' pad, K=3
    taps = []
    for kh in range(3):
        for kw in range(3):
            t = xp[:, kh:kh + stride * (H - 1) + 1:stride,
                   kw:kw + stride * (W - 1) + 1:stride, :]            # (N, H, W, 3)
            taps.append(t.reshape(N, HW, cin_img))
    x_col0 = jnp.concatenate(taps, axis=-1).reshape(N * HW, 9 * cin_img)

    cb = params["bb0_w"].shape[-1]
    c1 = params["dec1_w"].shape[-1]
    c2 = params["dec2_w"].shape[-1]
    ncls = params["cls_w"].shape[-1]

    # --- batch folding: M = b_blk * HW >= 128 rows per grid step ------------
    b_blk = N
    for cand in range(1, N + 1):
        if N % cand == 0 and cand * HW >= 128:
            b_blk = cand
            break
    m_blk = b_blk * HW
    grid = (N // b_blk,)

    # --- shift / boundary-mask matrices (host-side numpy constants) ---------
    conv3_offsets = tuple((kh - 1, kw - 1) for kh in range(3) for kw in range(3))
    aspp_offsets, aspp_groups = _surviving_aspp_offsets(H, W, ASPP_DILATIONS)
    uniq = sorted((set(conv3_offsets) | set(aspp_offsets)) - {(0, 0)})
    off_to_idx = {o: i for i, o in enumerate(uniq)}
    conv3_sidx = tuple(off_to_idx.get(o, -1) for o in conv3_offsets)
    aspp_sidx = tuple(off_to_idx.get(o, -1) for o in aspp_offsets)
    if uniq:
        shift_mats = np.stack(
            [_shift_matrix(dh, dw, b_blk, H, W) for dh, dw in uniq], axis=0)
    else:
        shift_mats = np.zeros((1, m_blk, m_blk), np.float32)

    def w3x3(w):                    # (3, 3, Cin, Cout) -> (9, Cin, Cout)
        return w.reshape(9, w.shape[-2], w.shape[-1])

    def b2d(b):
        return b.reshape(1, -1)

    # --- ASPP: dead-tap elimination + per-offset weight merging, padded to a
    #     lane-dense 128-wide output (classes in lanes [0, ncls)) -------------
    cls_blocks = []
    for grp in aspp_groups:
        wsum = params["cls_w"][grp[0][0], grp[0][1], grp[0][2]]
        for (b, kh, kw) in grp[1:]:
            wsum = wsum + params["cls_w"][b, kh, kw]
        cls_blocks.append(
            jnp.zeros((cb, OUT_LANES), jnp.float32).at[:, :ncls].set(wsum))
    w_cls_pad = jnp.stack(cls_blocks, axis=0)                    # (ntaps, CB, 128)

    # Depth head 1x1 conv accumulates straight into lane `ncls` of the slab.
    w_dep_pad = jnp.zeros((c2, OUT_LANES), jnp.float32).at[:, ncls].set(
        params["depth_w"].reshape(-1))
    b_out = jnp.zeros((1, OUT_LANES), jnp.float32)
    b_out = b_out.at[0, :ncls].set(jnp.sum(params["cls_b"], axis=0))
    b_out = b_out.at[0, ncls].set(params["depth_b"][0])

    inputs = [
        x_col0, shift_mats,
        params["bb0_w"].reshape(-1, cb), b2d(params["bb0_b"]),
        w3x3(params["bb1_w"]), b2d(params["bb1_b"]),
        w3x3(params["dec1_w"]), b2d(params["dec1_b"]),
        w3x3(params["dec2_w"]), b2d(params["dec2_b"]),
        params["dec4_w"].reshape(c2, cb), b2d(params["dec4_b"]),
        w_dep_pad, w_cls_pad, b_out,
    ]

    in_specs = [
        pl.BlockSpec((m_blk, x_col0.shape[-1]), lambda i: (i, 0)),
        pl.BlockSpec(shift_mats.shape, lambda i: (0, 0, 0)),
    ]
    for a in inputs[2:]:
        in_specs.append(pl.BlockSpec(a.shape, lambda i, nd=a.ndim: (0,) * nd))

    kern = functools.partial(_dada_fused_kernel,
                             conv3_sidx=conv3_sidx, aspp_sidx=aspp_sidx)

    slab = pl.pallas_call(
        kern,
        out_shape=jax.ShapeDtypeStruct((N * HW, OUT_LANES), jnp.float32),
        grid=grid,
        in_specs=in_specs,
        out_specs=pl.BlockSpec((m_blk, OUT_LANES), lambda i: (i, 0)),
        compiler_params=pltpu.CompilerParams(
            dimension_semantics=("parallel",),     # v7x: batch blocks across 2 TCs
            vmem_limit_bytes=32 * 1024 * 1024),
    )(*inputs)

    slab = slab.reshape(N, H, W, OUT_LANES)
    sem = slab[..., :ncls]
    dep = slab[..., ncls:ncls + 1]
    return {
        "semantic": jnp.transpose(sem, (0, 3, 1, 2)),   # back to NCHW
        "depth": jnp.transpose(dep, (0, 3, 1, 2)),
    }


# ----------------------------------------------------------------------------
# Parameters (deterministic, in-script)
# ----------------------------------------------------------------------------
def init_params(key):
    ks = jax.random.split(key, 8)

    def nrm(k, shape, std):
        return std * jax.random.normal(k, shape, jnp.float32)

    p = {}
    # Simplified backbone stem (stand-in for ResNet-101).
    p["bb0_w"] = nrm(ks[0], (3, 3, 3, CB), 0.1)
    p["bb0_b"] = jnp.zeros((CB,), jnp.float32)
    p["bb1_w"] = nrm(ks[1], (3, 3, CB, CB), 0.05)
    p["bb1_b"] = jnp.zeros((CB,), jnp.float32)
    # DecoderAuxBlock (conv weights ~ N(0, 0.001) as in _init_params; bias 0).
    p["dec1_w"] = nrm(ks[2], (3, 3, CB, C1), 0.001)
    p["dec1_b"] = jnp.zeros((C1,), jnp.float32)
    p["dec2_w"] = nrm(ks[3], (3, 3, C1, C2), 0.001)
    p["dec2_b"] = jnp.zeros((C2,), jnp.float32)
    p["dec4_w"] = nrm(ks[4], (1, 1, C2, CB), 0.001)
    p["dec4_b"] = jnp.zeros((CB,), jnp.float32)
    # DADADetphHead: 1x1 conv C2 -> 1.
    p["depth_w"] = nrm(ks[5], (1, 1, C2, 1), 0.001)
    p["depth_b"] = jnp.zeros((1,), jnp.float32)
    # DecFinalClassifier: 4 dilated 3x3 convs CB -> NUM_CLASSES, summed.
    p["cls_w"] = nrm(ks[6], (len(ASPP_DILATIONS), 3, 3, CB, NUM_CLASSES), 0.001)
    p["cls_b"] = jnp.zeros((len(ASPP_DILATIONS), NUM_CLASSES), jnp.float32)
    return p


# ----------------------------------------------------------------------------
# Pure-JAX reference (for correctness check only)
# ----------------------------------------------------------------------------
def _conv_ref(x, w, b, dilation=1):
    pad = dilation * (w.shape[0] - 1) // 2
    y = jax.lax.conv_general_dilated(
        x, w, window_strides=(1, 1), padding=[(pad, pad), (pad, pad)],
        rhs_dilation=(dilation, dilation),
        dimension_numbers=("NHWC", "HWIO", "NHWC"))
    return y + b


def dada_forward_ref(params, x_nchw):
    x = jnp.transpose(x_nchw, (0, 2, 3, 1)).astype(jnp.float32)
    x = jax.nn.relu(_conv_ref(x, params["bb0_w"], params["bb0_b"]))
    x = x[:, ::4, ::4, :]
    x = jax.nn.relu(_conv_ref(x, params["bb1_w"], params["bb1_b"]))
    d1 = jax.nn.relu(_conv_ref(x, params["dec1_w"], params["dec1_b"]))
    x4_dec3 = jax.nn.relu(_conv_ref(d1, params["dec2_w"], params["dec2_b"]))
    x4_dec4 = _conv_ref(x4_dec3, params["dec4_w"], params["dec4_b"])
    depth = _conv_ref(x4_dec3, params["depth_w"], params["depth_b"])
    xf = x * x4_dec4
    sem = sum(_conv_ref(xf, params["cls_w"][i], params["cls_b"][i], dilation=d)
              for i, d in enumerate(ASPP_DILATIONS))
    return {"semantic": jnp.transpose(sem, (0, 3, 1, 2)),
            "depth": jnp.transpose(depth, (0, 3, 1, 2))}


def _max_rel_err(a, b):
    return float(jnp.max(jnp.abs(a - b)) / (jnp.max(jnp.abs(b)) + 1e-30))


# ----------------------------------------------------------------------------
if __name__ == "__main__":
    key = jax.random.PRNGKey(0)
    k_x, k_p = jax.random.split(key)
    x = jax.random.normal(k_x, (2, 3, 32, 32), jnp.float32)  # NCHW input image
    params = init_params(k_p)

    pred = dada_forward(params, x)
    pred = jax.block_until_ready(pred)

    assert pred["semantic"].shape == (2, NUM_CLASSES, 8, 8), pred["semantic"].shape
    assert pred["depth"].shape == (2, 1, 8, 8), pred["depth"].shape
    assert bool(jnp.all(jnp.isfinite(pred["semantic"])))
    assert bool(jnp.all(jnp.isfinite(pred["depth"])))

    ref = dada_forward_ref(params, x)
    assert _max_rel_err(pred["semantic"], ref["semantic"]) < 1e-3
    assert _max_rel_err(pred["depth"], ref["depth"]) < 1e-3

    print("KERNEL_OK")
</pallas_src>

<mosaic_0001>
module attributes {stable_mosaic.version = 11 : i64} {
  func.func @_dada_fused_kernel(%arg0: i32, %arg1: memref<128x27xf32, #tpu.memory_space<vmem>>, %arg2: memref<16x128x128xf32, #tpu.memory_space<vmem>>, %arg3: memref<27x32xf32, #tpu.memory_space<vmem>>, %arg4: memref<1x32xf32, #tpu.memory_space<vmem>>, %arg5: memref<9x32x32xf32, #tpu.memory_space<vmem>>, %arg6: memref<1x32xf32, #tpu.memory_space<vmem>>, %arg7: memref<9x32x16xf32, #tpu.memory_space<vmem>>, %arg8: memref<1x16xf32, #tpu.memory_space<vmem>>, %arg9: memref<9x16x8xf32, #tpu.memory_space<vmem>>, %arg10: memref<1x8xf32, #tpu.memory_space<vmem>>, %arg11: memref<8x32xf32, #tpu.memory_space<vmem>>, %arg12: memref<1x32xf32, #tpu.memory_space<vmem>>, %arg13: memref<8x128xf32, #tpu.memory_space<vmem>>, %arg14: memref<9x32x128xf32, #tpu.memory_space<vmem>>, %arg15: memref<1x128xf32, #tpu.memory_space<vmem>>, %arg16: memref<128x128xf32, #tpu.memory_space<vmem>>) attributes {dimension_semantics = [#tpu.dimension_semantics<parallel>], iteration_bounds = array<i64: 1>, scalar_prefetch = 0 : i64, scratch_operands = 0 : i64, tpu.core_type = #tpu.core_type<tc>, window_params = [{transform_indices = @transform_0, window_bounds = array<i64: 128, 27>}, {pipeline_mode = #tpu.pipeline_mode<synchronous>, transform_indices = @transform_1, window_bounds = array<i64: 16, 128, 128>}, {pipeline_mode = #tpu.pipeline_mode<synchronous>, transform_indices = @transform_2, window_bounds = array<i64: 27, 32>}, {pipeline_mode = #tpu.pipeline_mode<synchronous>, transform_indices = @transform_3, window_bounds = array<i64: 1, 32>}, {pipeline_mode = #tpu.pipeline_mode<synchronous>, transform_indices = @transform_4, window_bounds = array<i64: 9, 32, 32>}, {pipeline_mode = #tpu.pipeline_mode<synchronous>, transform_indices = @transform_5, window_bounds = array<i64: 1, 32>}, {pipeline_mode = #tpu.pipeline_mode<synchronous>, transform_indices = @transform_6, window_bounds = array<i64: 9, 32, 16>}, {pipeline_mode = #tpu.pipeline_mode<synchronous>, transform_indices = @transform_7, window_bounds = array<i64: 1, 16>}, {pipeline_mode = #tpu.pipeline_mode<synchronous>, transform_indices = @transform_8, window_bounds = array<i64: 9, 16, 8>}, {pipeline_mode = #tpu.pipeline_mode<synchronous>, transform_indices = @transform_9, window_bounds = array<i64: 1, 8>}, {pipeline_mode = #tpu.pipeline_mode<synchronous>, transform_indices = @transform_10, window_bounds = array<i64: 8, 32>}, {pipeline_mode = #tpu.pipeline_mode<synchronous>, transform_indices = @transform_11, window_bounds = array<i64: 1, 32>}, {pipeline_mode = #tpu.pipeline_mode<synchronous>, transform_indices = @transform_12, window_bounds = array<i64: 8, 128>}, {pipeline_mode = #tpu.pipeline_mode<synchronous>, transform_indices = @transform_13, window_bounds = array<i64: 9, 32, 128>}, {pipeline_mode = #tpu.pipeline_mode<synchronous>, transform_indices = @transform_14, window_bounds = array<i64: 1, 128>}, {transform_indices = @transform_15, window_bounds = array<i64: 128, 128>}]} {
    %c0 = arith.constant 0 : index
    %c0_0 = arith.constant 0 : index
    %0 = vector.load %arg1[%c0, %c0_0] : memref<128x27xf32, #tpu.memory_space<vmem>>, vector<128x27xf32>
    %c0_1 = arith.constant 0 : index
    %c0_2 = arith.constant 0 : index
    %1 = vector.load %arg3[%c0_1, %c0_2] : memref<27x32xf32, #tpu.memory_space<vmem>>, vector<27x32xf32>
    %cst = arith.constant dense<0.000000e+00> : vector<128x32xf32>
    %2 = tpu.matmul %0, %1, %cst {dimension_numbers = #tpu.dot_dimension_numbers<[1], [0], [0], [1], [0, 0, 1, 1], [], []>} : vector<128x27xf32>, vector<27x32xf32>, vector<128x32xf32> -> vector<128x32xf32>
    %c0_3 = arith.constant 0 : index
    %c0_4 = arith.constant 0 : index
    %3 = vector.load %arg4[%c0_3, %c0_4] : memref<1x32xf32, #tpu.memory_space<vmem>>, vector<1x32xf32>
    %4 = vector.broadcast %3 : vector<1x32xf32> to vector<128x32xf32>
    %5 = arith.addf %2, %4 : vector<128x32xf32>
    %cst_5 = arith.constant 0.000000e+00 : f32
    %6 = vector.broadcast %cst_5 : f32 to vector<128x32xf32>
    %7 = arith.maximumf %5, %6 : vector<128x32xf32>
    %c0_6 = arith.constant 0 : index
    %c0_7 = arith.constant 0 : index
    %8 = vector.load %arg6[%c0_6, %c0_7] : memref<1x32xf32, #tpu.memory_space<vmem>>, vector<1x32xf32>
    %c3 = arith.constant 3 : index
    %c0_8 = arith.constant 0 : index
    %c0_9 = arith.constant 0 : index
    %9 = vector.load %arg2[%c3, %c0_8, %c0_9] : memref<16x128x128xf32, #tpu.memory_space<vmem>>, vector<1x128x128xf32>
    %10 = vector.shape_cast %9 : vector<1x128x128xf32> to vector<128x128xf32>
    %cst_10 = arith.constant dense<0.000000e+00> : vector<128x32xf32>
    %11 = tpu.matmul %10, %7, %cst_10 {dimension_numbers = #tpu.dot_dimension_numbers<[1], [0], [0], [1], [0, 0, 1, 1], [], []>} : vector<128x128xf32>, vector<128x32xf32>, vector<128x32xf32> -> vector<128x32xf32>
    %c0_11 = arith.constant 0 : index
    %c0_12 = arith.constant 0 : index
    %c0_13 = arith.constant 0 : index
    %12 = vector.load %arg5[%c0_11, %c0_12, %c0_13] : memref<9x32x32xf32, #tpu.memory_space<vmem>>, vector<1x32x32xf32>
    %13 = vector.shape_cast %12 : vector<1x32x32xf32> to vector<32x32xf32>
    %cst_14 = arith.constant dense<0.000000e+00> : vector<128x32xf32>
    %14 = tpu.matmul %11, %13, %cst_14 {dimension_numbers = #tpu.dot_dimension_numbers<[1], [0], [0], [1], [0, 0, 1, 1], [], []>} : vector<128x32xf32>, vector<32x32xf32>, vector<128x32xf32> -> vector<128x32xf32>
    %15 = vector.broadcast %8 : vector<1x32xf32> to vector<128x32xf32>
    %16 = arith.addf %15, %14 : vector<128x32xf32>
    %c4 = arith.constant 4 : index
    %c0_15 = arith.constant 0 : index
    %c0_16 = arith.constant 0 : index
    %17 = vector.load %arg2[%c4, %c0_15, %c0_16] : memref<16x128x128xf32, #tpu.memory_space<vmem>>, vector<1x128x128xf32>
    %18 = vector.shape_cast %17 : vector<1x128x128xf32> to vector<128x128xf32>
    %cst_17 = arith.constant dense<0.000000e+00> : vector<128x32xf32>
    %19 = tpu.matmul %18, %7, %cst_17 {dimension_numbers = #tpu.dot_dimension_numbers<[1], [0], [0], [1], [0, 0, 1, 1], [], []>} : vector<128x128xf32>, vector<128x32xf32>, vector<128x32xf32> -> vector<128x32xf32>
    %c1 = arith.constant 1 : index
    %c0_18 = arith.constant 0 : index
    %c0_19 = arith.constant 0 : index
    %20 = vector.load %arg5[%c1, %c0_18, %c0_19] : memref<9x32x32xf32, #tpu.memory_space<vmem>>, vector<1x32x32xf32>
    %21 = vector.shape_cast %20 : vector<1x32x32xf32> to vector<32x32xf32>
    %cst_20 = arith.constant dense<0.000000e+00> : vector<128x32xf32>
    %22 = tpu.matmul %19, %21, %cst_20 {dimension_numbers = #tpu.dot_dimension_numbers<[1], [0], [0], [1], [0, 0, 1, 1], [], []>} : vector<128x32xf32>, vector<32x32xf32>, vector<128x32xf32> -> vector<128x32xf32>
    %23 = arith.addf %16, %22 : vector<128x32xf32>
    %c5 = arith.constant 5 : index
    %c0_21 = arith.constant 0 : index
    %c0_22 = arith.constant 0 : index
    %24 = vector.load %arg2[%c5, %c0_21, %c0_22] : memref<16x128x128xf32, #tpu.memory_space<vmem>>, vector<1x128x128xf32>
    %25 = vector.shape_cast %24 : vector<1x128x128xf32> to vector<128x128xf32>
    %cst_23 = arith.constant dense<0.000000e+00> : vector<128x32xf32>
    %26 = tpu.matmul %25, %7, %cst_23 {dimension_numbers = #tpu.dot_dimension_numbers<[1], [0], [0], [1], [0, 0, 1, 1], [], []>} : vector<128x128xf32>, vector<128x32xf32>, vector<128x32xf32> -> vector<128x32xf32>
    %c2 = arith.constant 2 : index
    %c0_24 = arith.constant 0 : index
    %c0_25 = arith.constant 0 : index
    %27 = vector.load %arg5[%c2, %c0_24, %c0_25] : memref<9x32x32xf32, #tpu.memory_space<vmem>>, vector<1x32x32xf32>
    %28 = vector.shape_cast %27 : vector<1x32x32xf32> to vector<32x32xf32>
    %cst_26 = arith.constant dense<0.000000e+00> : vector<128x32xf32>
    %29 = tpu.matmul %26, %28, %cst_26 {dimension_numbers = #tpu.dot_dimension_numbers<[1], [0], [0], [1], [0, 0, 1, 1], [], []>} : vector<128x32xf32>, vector<32x32xf32>, vector<128x32xf32> -> vector<128x32xf32>
    %30 = arith.addf %23, %29 : vector<128x32xf32>
    %c7 = arith.constant 7 : index
    %c0_27 = arith.constant 0 : index
    %c0_28 = arith.constant 0 : index
    %31 = vector.load %arg2[%c7, %c0_27, %c0_28] : memref<16x128x128xf32, #tpu.memory_space<vmem>>, vector<1x128x128xf32>
    %32 = vector.shape_cast %31 : vector<1x128x128xf32> to vector<128x128xf32>
    %cst_29 = arith.constant dense<0.000000e+00> : vector<128x32xf32>
    %33 = tpu.matmul %32, %7, %cst_29 {dimension_numbers = #tpu.dot_dimension_numbers<[1], [0], [0], [1], [0, 0, 1, 1], [], []>} : vector<128x128xf32>, vector<128x32xf32>, vector<128x32xf32> -> vector<128x32xf32>
    %c3_30 = arith.constant 3 : index
    %c0_31 = arith.constant 0 : index
    %c0_32 = arith.constant 0 : index
    %34 = vector.load %arg5[%c3_30, %c0_31, %c0_32] : memref<9x32x32xf32, #tpu.memory_space<vmem>>, vector<1x32x32xf32>
    %35 = vector.shape_cast %34 : vector<1x32x32xf32> to vector<32x32xf32>
    %cst_33 = arith.constant dense<0.000000e+00> : vector<128x32xf32>
    %36 = tpu.matmul %33, %35, %cst_33 {dimension_numbers = #tpu.dot_dimension_numbers<[1], [0], [0], [1], [0, 0, 1, 1], [], []>} : vector<128x32xf32>, vector<32x32xf32>, vector<128x32xf32> -> vector<128x32xf32>
    %37 = arith.addf %30, %36 : vector<128x32xf32>
    %c4_34 = arith.constant 4 : index
    %c0_35 = arith.constant 0 : index
    %c0_36 = arith.constant 0 : index
    %38 = vector.load %arg5[%c4_34, %c0_35, %c0_36] : memref<9x32x32xf32, #tpu.memory_space<vmem>>, vector<1x32x32xf32>
    %39 = vector.shape_cast %38 : vector<1x32x32xf32> to vector<32x32xf32>
    %cst_37 = arith.constant dense<0.000000e+00> : vector<128x32xf32>
    %40 = tpu.matmul %7, %39, %cst_37 {dimension_numbers = #tpu.dot_dimension_numbers<[1], [0], [0], [1], [0, 0, 1, 1], [], []>} : vector<128x32xf32>, vector<32x32xf32>, vector<128x32xf32> -> vector<128x32xf32>
    %41 = arith.addf %37, %40 : vector<128x32xf32>
    %c8 = arith.constant 8 : index
    %c0_38 = arith.constant 0 : index
    %c0_39 = arith.constant 0 : index
    %42 = vector.load %arg2[%c8, %c0_38, %c0_39] : memref<16x128x128xf32, #tpu.memory_space<vmem>>, vector<1x128x128xf32>
    %43 = vector.shape_cast %42 : vector<1x128x128xf32> to vector<128x128xf32>
    %cst_40 = arith.constant dense<0.000000e+00> : vector<128x32xf32>
    %44 = tpu.matmul %43, %7, %cst_40 {dimension_numbers = #tpu.dot_dimension_numbers<[1], [0], [0], [1], [0, 0, 1, 1], [], []>} : vector<128x128xf32>, vector<128x32xf32>, vector<128x32xf32> -> vector<128x32xf32>
    %c5_41 = arith.constant 5 : index
    %c0_42 = arith.constant 0 : index
    %c0_43 = arith.constant 0 : index
    %45 = vector.load %arg5[%c5_41, %c0_42, %c0_43] : memref<9x32x32xf32, #tpu.memory_space<vmem>>, vector<1x32x32xf32>
    %46 = vector.shape_cast %45 : vector<1x32x32xf32> to vector<32x32xf32>
    %cst_44 = arith.constant dense<0.000000e+00> : vector<128x32xf32>
    %47 = tpu.matmul %44, %46, %cst_44 {dimension_numbers = #tpu.dot_dimension_numbers<[1], [0], [0], [1], [0, 0, 1, 1], [], []>} : vector<128x32xf32>, vector<32x32xf32>, vector<128x32xf32> -> vector<128x32xf32>
    %48 = arith.addf %41, %47 : vector<128x32xf32>
    %c10 = arith.constant 10 : index
    %c0_45 = arith.constant 0 : index
    %c0_46 = arith.constant 0 : index
    %49 = vector.load %arg2[%c10, %c0_45, %c0_46] : memref<16x128x128xf32, #tpu.memory_space<vmem>>, vector<1x128x128xf32>
    %50 = vector.shape_cast %49 : vector<1x128x128xf32> to vector<128x128xf32>
    %cst_47 = arith.constant dense<0.000000e+00> : vector<128x32xf32>
    %51 = tpu.matmul %50, %7, %cst_47 {dimension_numbers = #tpu.dot_dimension_numbers<[1], [0], [0], [1], [0, 0, 1, 1], [], []>} : vector<128x128xf32>, vector<128x32xf32>, vector<128x32xf32> -> vector<128x32xf32>
    %c6 = arith.constant 6 : index
    %c0_48 = arith.constant 0 : index
    %c0_49 = arith.constant 0 : index
    %52 = vector.load %arg5[%c6, %c0_48, %c0_49] : memref<9x32x32xf32, #tpu.memory_space<vmem>>, vector<1x32x32xf32>
    %53 = vector.shape_cast %52 : vector<1x32x32xf32> to vector<32x32xf32>
    %cst_50 = arith.constant dense<0.000000e+00> : vector<128x32xf32>
    %54 = tpu.matmul %51, %53, %cst_50 {dimension_numbers = #tpu.dot_dimension_numbers<[1], [0], [0], [1], [0, 0, 1, 1], [], []>} : vector<128x32xf32>, vector<32x32xf32>, vector<128x32xf32> -> vector<128x32xf32>
    %55 = arith.addf %48, %54 : vector<128x32xf32>
    %c11 = arith.constant 11 : index
    %c0_51 = arith.constant 0 : index
    %c0_52 = arith.constant 0 : index
    %56 = vector.load %arg2[%c11, %c0_51, %c0_52] : memref<16x128x128xf32, #tpu.memory_space<vmem>>, vector<1x128x128xf32>
    %57 = vector.shape_cast %56 : vector<1x128x128xf32> to vector<128x128xf32>
    %cst_53 = arith.constant dense<0.000000e+00> : vector<128x32xf32>
    %58 = tpu.matmul %57, %7, %cst_53 {dimension_numbers = #tpu.dot_dimension_numbers<[1], [0], [0], [1], [0, 0, 1, 1], [], []>} : vector<128x128xf32>, vector<128x32xf32>, vector<128x32xf32> -> vector<128x32xf32>
    %c7_54 = arith.constant 7 : index
    %c0_55 = arith.constant 0 : index
    %c0_56 = arith.constant 0 : index
    %59 = vector.load %arg5[%c7_54, %c0_55, %c0_56] : memref<9x32x32xf32, #tpu.memory_space<vmem>>, vector<1x32x32xf32>
    %60 = vector.shape_cast %59 : vector<1x32x32xf32> to vector<32x32xf32>
    %cst_57 = arith.constant dense<0.000000e+00> : vector<128x32xf32>
    %61 = tpu.matmul %58, %60, %cst_57 {dimension_numbers = #tpu.dot_dimension_numbers<[1], [0], [0], [1], [0, 0, 1, 1], [], []>} : vector<128x32xf32>, vector<32x32xf32>, vector<128x32xf32> -> vector<128x32xf32>
    %62 = arith.addf %55, %61 : vector<128x32xf32>
    %c12 = arith.constant 12 : index
    %c0_58 = arith.constant 0 : index
    %c0_59 = arith.constant 0 : index
    %63 = vector.load %arg2[%c12, %c0_58, %c0_59] : memref<16x128x128xf32, #tpu.memory_space<vmem>>, vector<1x128x128xf32>
    %64 = vector.shape_cast %63 : vector<1x128x128xf32> to vector<128x128xf32>
    %cst_60 = arith.constant dense<0.000000e+00> : vector<128x32xf32>
    %65 = tpu.matmul %64, %7, %cst_60 {dimension_numbers = #tpu.dot_dimension_numbers<[1], [0], [0], [1], [0, 0, 1, 1], [], []>} : vector<128x128xf32>, vector<128x32xf32>, vector<128x32xf32> -> vector<128x32xf32>
    %c8_61 = arith.constant 8 : index
    %c0_62 = arith.constant 0 : index
    %c0_63 = arith.constant 0 : index
    %66 = vector.load %arg5[%c8_61, %c0_62, %c0_63] : memref<9x32x32xf32, #tpu.memory_space<vmem>>, vector<1x32x32xf32>
    %67 = vector.shape_cast %66 : vector<1x32x32xf32> to vector<32x32xf32>
    %cst_64 = arith.constant dense<0.000000e+00> : vector<128x32xf32>
    %68 = tpu.matmul %65, %67, %cst_64 {dimension_numbers = #tpu.dot_dimension_numbers<[1], [0], [0], [1], [0, 0, 1, 1], [], []>} : vector<128x32xf32>, vector<32x32xf32>, vector<128x32xf32> -> vector<128x32xf32>
    %69 = arith.addf %62, %68 : vector<128x32xf32>
    %cst_65 = arith.constant 0.000000e+00 : f32
    %70 = vector.broadcast %cst_65 : f32 to vector<128x32xf32>
    %71 = arith.maximumf %69, %70 : vector<128x32xf32>
    %c0_66 = arith.constant 0 : index
    %c0_67 = arith.constant 0 : index
    %72 = vector.load %arg8[%c0_66, %c0_67] : memref<1x16xf32, #tpu.memory_space<vmem>>, vector<1x16xf32>
    %c3_68 = arith.constant 3 : index
    %c0_69 = arith.constant 0 : index
    %c0_70 = arith.constant 0 : index
    %73 = vector.load %arg2[%c3_68, %c0_69, %c0_70] : memref<16x128x128xf32, #tpu.memory_space<vmem>>, vector<1x128x128xf32>
    %74 = vector.shape_cast %73 : vector<1x128x128xf32> to vector<128x128xf32>
    %cst_71 = arith.constant dense<0.000000e+00> : vector<128x32xf32>
    %75 = tpu.matmul %74, %71, %cst_71 {dimension_numbers = #tpu.dot_dimension_numbers<[1], [0], [0], [1], [0, 0, 1, 1], [], []>} : vector<128x128xf32>, vector<128x32xf32>, vector<128x32xf32> -> vector<128x32xf32>
    %c0_72 = arith.constant 0 : index
    %c0_73 = arith.constant 0 : index
    %c0_74 = arith.constant 0 : index
    %76 = vector.load %arg7[%c0_72, %c0_73, %c0_74] : memref<9x32x16xf32, #tpu.memory_space<vmem>>, vector<1x32x16xf32>
    %77 = vector.shape_cast %76 : vector<1x32x16xf32> to vector<32x16xf32>
    %cst_75 = arith.constant dense<0.000000e+00> : vector<128x16xf32>
    %78 = tpu.matmul %75, %77, %cst_75 {dimension_numbers = #tpu.dot_dimension_numbers<[1], [0], [0], [1], [0, 0, 1, 1], [], []>} : vector<128x32xf32>, vector<32x16xf32>, vector<128x16xf32> -> vector<128x16xf32>
    %79 = vector.broadcast %72 : vector<1x16xf32> to vector<128x16xf32>
    %80 = arith.addf %79, %78 : vector<128x16xf32>
    %c4_76 = arith.constant 4 : index
    %c0_77 = arith.constant 0 : index
    %c0_78 = arith.constant 0 : index
    %81 = vector.load %arg2[%c4_76, %c0_77, %c0_78] : memref<16x128x128xf32, #tpu.memory_space<vmem>>, vector<1x128x128xf32>
    %82 = vector.shape_cast %81 : vector<1x128x128xf32> to vector<128x128xf32>
    %cst_79 = arith.constant dense<0.000000e+00> : vector<128x32xf32>
    %83 = tpu.matmul %82, %71, %cst_79 {dimension_numbers = #tpu.dot_dimension_numbers<[1], [0], [0], [1], [0, 0, 1, 1], [], []>} : vector<128x128xf32>, vector<128x32xf32>, vector<128x32xf32> -> vector<128x32xf32>
    %c1_80 = arith.constant 1 : index
    %c0_81 = arith.constant 0 : index
    %c0_82 = arith.constant 0 : index
    %84 = vector.load %arg7[%c1_80, %c0_81, %c0_82] : memref<9x32x16xf32, #tpu.memory_space<vmem>>, vector<1x32x16xf32>
    %85 = vector.shape_cast %84 : vector<1x32x16xf32> to vector<32x16xf32>
    %cst_83 = arith.constant dense<0.000000e+00> : vector<128x16xf32>
    %86 = tpu.matmul %83, %85, %cst_83 {dimension_numbers = #tpu.dot_dimension_numbers<[1], [0], [0], [1], [0, 0, 1, 1], [], []>} : vector<128x32xf32>, vector<32x16xf32>, vector<128x16xf32> -> vector<128x16xf32>
    %87 = arith.addf %80, %86 : vector<128x16xf32>
    %c5_84 = arith.constant 5 : index
    %c0_85 = arith.constant 0 : index
    %c0_86 = arith.constant 0 : index
    %88 = vector.load %arg2[%c5_84, %c0_85, %c0_86] : memref<16x128x128xf32, #tpu.memory_space<vmem>>, vector<1x128x128xf32>
    %89 = vector.shape_cast %88 : vector<1x128x128xf32> to vector<128x128xf32>
    %cst_87 = arith.constant dense<0.000000e+00> : vector<128x32xf32>
    %90 = tpu.matmul %89, %71, %cst_87 {dimension_numbers = #tpu.dot_dimension_numbers<[1], [0], [0], [1], [0, 0, 1, 1], [], []>} : vector<128x128xf32>, vector<128x32xf32>, vector<128x32xf32> -> vector<128x32xf32>
    %c2_88 = arith.constant 2 : index
    %c0_89 = arith.constant 0 : index
    %c0_90 = arith.constant 0 : index
    %91 = vector.load %arg7[%c2_88, %c0_89, %c0_90] : memref<9x32x16xf32, #tpu.memory_space<vmem>>, vector<1x32x16xf32>
    %92 = vector.shape_cast %91 : vector<1x32x16xf32> to vector<32x16xf32>
    %cst_91 = arith.constant dense<0.000000e+00> : vector<128x16xf32>
    %93 = tpu.matmul %90, %92, %cst_91 {dimension_numbers = #tpu.dot_dimension_numbers<[1], [0], [0], [1], [0, 0, 1, 1], [], []>} : vector<128x32xf32>, vector<32x16xf32>, vector<128x16xf32> -> vector<128x16xf32>
    %94 = arith.addf %87, %93 : vector<128x16xf32>
    %c7_92 = arith.constant 7 : index
    %c0_93 = arith.constant 0 : index
    %c0_94 = arith.constant 0 : index
    %95 = vector.load %arg2[%c7_92, %c0_93, %c0_94] : memref<16x128x128xf32, #tpu.memory_space<vmem>>, vector<1x128x128xf32>
    %96 = vector.shape_cast %95 : vector<1x128x128xf32> to vector<128x128xf32>
    %cst_95 = arith.constant dense<0.000000e+00> : vector<128x32xf32>
    %97 = tpu.matmul %96, %71, %cst_95 {dimension_numbers = #tpu.dot_dimension_numbers<[1], [0], [0], [1], [0, 0, 1, 1], [], []>} : vector<128x128xf32>, vector<128x32xf32>, vector<128x32xf32> -> vector<128x32xf32>
    %c3_96 = arith.constant 3 : index
    %c0_97 = arith.constant 0 : index
    %c0_98 = arith.constant 0 : index
    %98 = vector.load %arg7[%c3_96, %c0_97, %c0_98] : memref<9x32x16xf32, #tpu.memory_space<vmem>>, vector<1x32x16xf32>
    %99 = vector.shape_cast %98 : vector<1x32x16xf32> to vector<32x16xf32>
    %cst_99 = arith.constant dense<0.000000e+00> : vector<128x16xf32>
    %100 = tpu.matmul %97, %99, %cst_99 {dimension_numbers = #tpu.dot_dimension_numbers<[1], [0], [0], [1], [0, 0, 1, 1], [], []>} : vector<128x32xf32>, vector<32x16xf32>, vector<128x16xf32> -> vector<128x16xf32>
    %101 = arith.addf %94, %100 : vector<128x16xf32>
    %c4_100 = arith.constant 4 : index
    %c0_101 = arith.constant 0 : index
    %c0_102 = arith.constant 0 : index
    %102 = vector.load %arg7[%c4_100, %c0_101, %c0_102] : memref<9x32x16xf32, #tpu.memory_space<vmem>>, vector<1x32x16xf32>
    %103 = vector.shape_cast %102 : vector<1x32x16xf32> to vector<32x16xf32>
    %cst_103 = arith.constant dense<0.000000e+00> : vector<128x16xf32>
    %104 = tpu.matmul %71, %103, %cst_103 {dimension_numbers = #tpu.dot_dimension_numbers<[1], [0], [0], [1], [0, 0, 1, 1], [], []>} : vector<128x32xf32>, vector<32x16xf32>, vector<128x16xf32> -> vector<128x16xf32>
    %105 = arith.addf %101, %104 : vector<128x16xf32>
    %c8_104 = arith.constant 8 : index
    %c0_105 = arith.constant 0 : index
    %c0_106 = arith.constant 0 : index
    %106 = vector.load %arg2[%c8_104, %c0_105, %c0_106] : memref<16x128x128xf32, #tpu.memory_space<vmem>>, vector<1x128x128xf32>
    %107 = vector.shape_cast %106 : vector<1x128x128xf32> to vector<128x128xf32>
    %cst_107 = arith.constant dense<0.000000e+00> : vector<128x32xf32>
    %108 = tpu.matmul %107, %71, %cst_107 {dimension_numbers = #tpu.dot_dimension_numbers<[1], [0], [0], [1], [0, 0, 1, 1], [], []>} : vector<128x128xf32>, vector<128x32xf32>, vector<128x32xf32> -> vector<128x32xf32>
    %c5_108 = arith.constant 5 : index
    %c0_109 = arith.constant 0 : index
    %c0_110 = arith.constant 0 : index
    %109 = vector.load %arg7[%c5_108, %c0_109, %c0_110] : memref<9x32x16xf32, #tpu.memory_space<vmem>>, vector<1x32x16xf32>
    %110 = vector.shape_cast %109 : vector<1x32x16xf32> to vector<32x16xf32>
    %cst_111 = arith.constant dense<0.000000e+00> : vector<128x16xf32>
    %111 = tpu.matmul %108, %110, %cst_111 {dimension_numbers = #tpu.dot_dimension_numbers<[1], [0], [0], [1], [0, 0, 1, 1], [], []>} : vector<128x32xf32>, vector<32x16xf32>, vector<128x16xf32> -> vector<128x16xf32>
    %112 = arith.addf %105, %111 : vector<128x16xf32>
    %c10_112 = arith.constant 10 : index
    %c0_113 = arith.constant 0 : index
    %c0_114 = arith.constant 0 : index
    %113 = vector.load %arg2[%c10_112, %c0_113, %c0_114] : memref<16x128x128xf32, #tpu.memory_space<vmem>>, vector<1x128x128xf32>
    %114 = vector.shape_cast %113 : vector<1x128x128xf32> to vector<128x128xf32>
    %cst_115 = arith.constant dense<0.000000e+00> : vector<128x32xf32>
    %115 = tpu.matmul %114, %71, %cst_115 {dimension_numbers = #tpu.dot_dimension_numbers<[1], [0], [0], [1], [0, 0, 1, 1], [], []>} : vector<128x128xf32>, vector<128x32xf32>, vector<128x32xf32> -> vector<128x32xf32>
    %c6_116 = arith.constant 6 : index
    %c0_117 = arith.constant 0 : index
    %c0_118 = arith.constant 0 : index
    %116 = vector.load %arg7[%c6_116, %c0_117, %c0_118] : memref<9x32x16xf32, #tpu.memory_space<vmem>>, vector<1x32x16xf32>
    %117 = vector.shape_cast %116 : vector<1x32x16xf32> to vector<32x16xf32>
    %cst_119 = arith.constant dense<0.000000e+00> : vector<128x16xf32>
    %118 = tpu.matmul %115, %117, %cst_119 {dimension_numbers = #tpu.dot_dimension_numbers<[1], [0], [0], [1], [0, 0, 1, 1], [], []>} : vector<128x32xf32>, vector<32x16xf32>, vector<128x16xf32> -> vector<128x16xf32>
    %119 = arith.addf %112, %118 : vector<128x16xf32>
    %c11_120 = arith.constant 11 : index
    %c0_121 = arith.constant 0 : index
    %c0_122 = arith.constant 0 : index
    %120 = vector.load %arg2[%c11_120, %c0_121, %c0_122] : memref<16x128x128xf32, #tpu.memory_space<vmem>>, vector<1x128x128xf32>
    %121 = vector.shape_cast %120 : vector<1x128x128xf32> to vector<128x128xf32>
    %cst_123 = arith.constant dense<0.000000e+00> : vector<128x32xf32>
    %122 = tpu.matmul %121, %71, %cst_123 {dimension_numbers = #tpu.dot_dimension_numbers<[1], [0], [0], [1], [0, 0, 1, 1], [], []>} : vector<128x128xf32>, vector<128x32xf32>, vector<128x32xf32> -> vector<128x32xf32>
    %c7_124 = arith.constant 7 : index
    %c0_125 = arith.constant 0 : index
    %c0_126 = arith.constant 0 : index
    %123 = vector.load %arg7[%c7_124, %c0_125, %c0_126] : memref<9x32x16xf32, #tpu.memory_space<vmem>>, vector<1x32x16xf32>
    %124 = vector.shape_cast %123 : vector<1x32x16xf32> to vector<32x16xf32>
    %cst_127 = arith.constant dense<0.000000e+00> : vector<128x16xf32>
    %125 = tpu.matmul %122, %124, %cst_127 {dimension_numbers = #tpu.dot_dimension_numbers<[1], [0], [0], [1], [0, 0, 1, 1], [], []>} : vector<128x32xf32>, vector<32x16xf32>, vector<128x16xf32> -> vector<128x16xf32>
    %126 = arith.addf %119, %125 : vector<128x16xf32>
    %c12_128 = arith.constant 12 : index
    %c0_129 = arith.constant 0 : index
    %c0_130 = arith.constant 0 : index
    %127 = vector.load %arg2[%c12_128, %c0_129, %c0_130] : memref<16x128x128xf32, #tpu.memory_space<vmem>>, vector<1x128x128xf32>
    %128 = vector.shape_cast %127 : vector<1x128x128xf32> to vector<128x128xf32>
    %cst_131 = arith.constant dense<0.000000e+00> : vector<128x32xf32>
    %129 = tpu.matmul %128, %71, %cst_131 {dimension_numbers = #tpu.dot_dimension_numbers<[1], [0], [0], [1], [0, 0, 1, 1], [], []>} : vector<128x128xf32>, vector<128x32xf32>, vector<128x32xf32> -> vector<128x32xf32>
    %c8_132 = arith.constant 8 : index
    %c0_133 = arith.constant 0 : index
    %c0_134 = arith.constant 0 : index
    %130 = vector.load %arg7[%c8_132, %c0_133, %c0_134] : memref<9x32x16xf32, #tpu.memory_space<vmem>>, vector<1x32x16xf32>
    %131 = vector.shape_cast %130 : vector<1x32x16xf32> to vector<32x16xf32>
    %cst_135 = arith.constant dense<0.000000e+00> : vector<128x16xf32>
    %132 = tpu.matmul %129, %131, %cst_135 {dimension_numbers = #tpu.dot_dimension_numbers<[1], [0], [0], [1], [0, 0, 1, 1], [], []>} : vector<128x32xf32>, vector<32x16xf32>, vector<128x16xf32> -> vector<128x16xf32>
    %133 = arith.addf %126, %132 : vector<128x16xf32>
    %cst_136 = arith.constant 0.000000e+00 : f32
    %134 = vector.broadcast %cst_136 : f32 to vector<128x16xf32>
    %135 = arith.maximumf %133, %134 : vector<128x16xf32>
    %c0_137 = arith.constant 0 : index
    %c0_138 = arith.constant 0 : index
    %136 = vector.load %arg10[%c0_137, %c0_138] : memref<1x8xf32, #tpu.memory_space<vmem>>, vector<1x8xf32>
    %c3_139 = arith.constant 3 : index
    %c0_140 = arith.constant 0 : index
    %c0_141 = arith.constant 0 : index
    %137 = vector.load %arg2[%c3_139, %c0_140, %c0_141] : memref<16x128x128xf32, #tpu.memory_space<vmem>>, vector<1x128x128xf32>
    %138 = vector.shape_cast %137 : vector<1x128x128xf32> to vector<128x128xf32>
    %cst_142 = arith.constant dense<0.000000e+00> : vector<128x16xf32>
    %139 = tpu.matmul %138, %135, %cst_142 {dimension_numbers = #tpu.dot_dimension_numbers<[1], [0], [0], [1], [0, 0, 1, 1], [], []>} : vector<128x128xf32>, vector<128x16xf32>, vector<128x16xf32> -> vector<128x16xf32>
    %c0_143 = arith.constant 0 : index
    %c0_144 = arith.constant 0 : index
    %c0_145 = arith.constant 0 : index
    %140 = vector.load %arg9[%c0_143, %c0_144, %c0_145] : memref<9x16x8xf32, #tpu.memory_space<vmem>>, vector<1x16x8xf32>
    %141 = vector.shape_cast %140 : vector<1x16x8xf32> to vector<16x8xf32>
    %cst_146 = arith.constant dense<0.000000e+00> : vector<128x8xf32>
    %142 = tpu.matmul %139, %141, %cst_146 {dimension_numbers = #tpu.dot_dimension_numbers<[1], [0], [0], [1], [0, 0, 1, 1], [], []>} : vector<128x16xf32>, vector<16x8xf32>, vector<128x8xf32> -> vector<128x8xf32>
    %143 = vector.broadcast %136 : vector<1x8xf32> to vector<128x8xf32>
    %144 = arith.addf %143, %142 : vector<128x8xf32>
    %c4_147 = arith.constant 4 : index
    %c0_148 = arith.constant 0 : index
    %c0_149 = arith.constant 0 : index
    %145 = vector.load %arg2[%c4_147, %c0_148, %c0_149] : memref<16x128x128xf32, #tpu.memory_space<vmem>>, vector<1x128x128xf32>
    %146 = vector.shape_cast %145 : vector<1x128x128xf32> to vector<128x128xf32>
    %cst_150 = arith.constant dense<0.000000e+00> : vector<128x16xf32>
    %147 = tpu.matmul %146, %135, %cst_150 {dimension_numbers = #tpu.dot_dimension_numbers<[1], [0], [0], [1], [0, 0, 1, 1], [], []>} : vector<128x128xf32>, vector<128x16xf32>, vector<128x16xf32> -> vector<128x16xf32>
    %c1_151 = arith.constant 1 : index
    %c0_152 = arith.constant 0 : index
    %c0_153 = arith.constant 0 : index
    %148 = vector.load %arg9[%c1_151, %c0_152, %c0_153] : memref<9x16x8xf32, #tpu.memory_space<vmem>>, vector<1x16x8xf32>
    %149 = vector.shape_cast %148 : vector<1x16x8xf32> to vector<16x8xf32>
    %cst_154 = arith.constant dense<0.000000e+00> : vector<128x8xf32>
    %150 = tpu.matmul %147, %149, %cst_154 {dimension_numbers = #tpu.dot_dimension_numbers<[1], [0], [0], [1], [0, 0, 1, 1], [], []>} : vector<128x16xf32>, vector<16x8xf32>, vector<128x8xf32> -> vector<128x8xf32>
    %151 = arith.addf %144, %150 : vector<128x8xf32>
    %c5_155 = arith.constant 5 : index
    %c0_156 = arith.constant 0 : index
    %c0_157 = arith.constant 0 : index
    %152 = vector.load %arg2[%c5_155, %c0_156, %c0_157] : memref<16x128x128xf32, #tpu.memory_space<vmem>>, vector<1x128x128xf32>
    %153 = vector.shape_cast %152 : vector<1x128x128xf32> to vector<128x128xf32>
    %cst_158 = arith.constant dense<0.000000e+00> : vector<128x16xf32>
    %154 = tpu.matmul %153, %135, %cst_158 {dimension_numbers = #tpu.dot_dimension_numbers<[1], [0], [0], [1], [0, 0, 1, 1], [], []>} : vector<128x128xf32>, vector<128x16xf32>, vector<128x16xf32> -> vector<128x16xf32>
    %c2_159 = arith.constant 2 : index
    %c0_160 = arith.constant 0 : index
    %c0_161 = arith.constant 0 : index
    %155 = vector.load %arg9[%c2_159, %c0_160, %c0_161] : memref<9x16x8xf32, #tpu.memory_space<vmem>>, vector<1x16x8xf32>
    %156 = vector.shape_cast %155 : vector<1x16x8xf32> to vector<16x8xf32>
    %cst_162 = arith.constant dense<0.000000e+00> : vector<128x8xf32>
    %157 = tpu.matmul %154, %156, %cst_162 {dimension_numbers = #tpu.dot_dimension_numbers<[1], [0], [0], [1], [0, 0, 1, 1], [], []>} : vector<128x16xf32>, vector<16x8xf32>, vector<128x8xf32> -> vector<128x8xf32>
    %158 = arith.addf %151, %157 : vector<128x8xf32>
    %c7_163 = arith.constant 7 : index
    %c0_164 = arith.constant 0 : index
    %c0_165 = arith.constant 0 : index
    %159 = vector.load %arg2[%c7_163, %c0_164, %c0_165] : memref<16x128x128xf32, #tpu.memory_space<vmem>>, vector<1x128x128xf32>
    %160 = vector.shape_cast %159 : vector<1x128x128xf32> to vector<128x128xf32>
    %cst_166 = arith.constant dense<0.000000e+00> : vector<128x16xf32>
    %161 = tpu.matmul %160, %135, %cst_166 {dimension_numbers = #tpu.dot_dimension_numbers<[1], [0], [0], [1], [0, 0, 1, 1], [], []>} : vector<128x128xf32>, vector<128x16xf32>, vector<128x16xf32> -> vector<128x16xf32>
    %c3_167 = arith.constant 3 : index
    %c0_168 = arith.constant 0 : index
    %c0_169 = arith.constant 0 : index
    %162 = vector.load %arg9[%c3_167, %c0_168, %c0_169] : memref<9x16x8xf32, #tpu.memory_space<vmem>>, vector<1x16x8xf32>
    %163 = vector.shape_cast %162 : vector<1x16x8xf32> to vector<16x8xf32>
    %cst_170 = arith.constant dense<0.000000e+00> : vector<128x8xf32>
    %164 = tpu.matmul %161, %163, %cst_170 {dimension_numbers = #tpu.dot_dimension_numbers<[1], [0], [0], [1], [0, 0, 1, 1], [], []>} : vector<128x16xf32>, vector<16x8xf32>, vector<128x8xf32> -> vector<128x8xf32>
    %165 = arith.addf %158, %164 : vector<128x8xf32>
    %c4_171 = arith.constant 4 : index
    %c0_172 = arith.constant 0 : index
    %c0_173 = arith.constant 0 : index
    %166 = vector.load %arg9[%c4_171, %c0_172, %c0_173] : memref<9x16x8xf32, #tpu.memory_space<vmem>>, vector<1x16x8xf32>
    %167 = vector.shape_cast %166 : vector<1x16x8xf32> to vector<16x8xf32>
    %cst_174 = arith.constant dense<0.000000e+00> : vector<128x8xf32>
    %168 = tpu.matmul %135, %167, %cst_174 {dimension_numbers = #tpu.dot_dimension_numbers<[1], [0], [0], [1], [0, 0, 1, 1], [], []>} : vector<128x16xf32>, vector<16x8xf32>, vector<128x8xf32> -> vector<128x8xf32>
    %169 = arith.addf %165, %168 : vector<128x8xf32>
    %c8_175 = arith.constant 8 : index
    %c0_176 = arith.constant 0 : index
    %c0_177 = arith.constant 0 : index
    %170 = vector.load %arg2[%c8_175, %c0_176, %c0_177] : memref<16x128x128xf32, #tpu.memory_space<vmem>>, vector<1x128x128xf32>
    %171 = vector.shape_cast %170 : vector<1x128x128xf32> to vector<128x128xf32>
    %cst_178 = arith.constant dense<0.000000e+00> : vector<128x16xf32>
    %172 = tpu.matmul %171, %135, %cst_178 {dimension_numbers = #tpu.dot_dimension_numbers<[1], [0], [0], [1], [0, 0, 1, 1], [], []>} : vector<128x128xf32>, vector<128x16xf32>, vector<128x16xf32> -> vector<128x16xf32>
    %c5_179 = arith.constant 5 : index
    %c0_180 = arith.constant 0 : index
    %c0_181 = arith.constant 0 : index
    %173 = vector.load %arg9[%c5_179, %c0_180, %c0_181] : memref<9x16x8xf32, #tpu.memory_space<vmem>>, vector<1x16x8xf32>
    %174 = vector.shape_cast %173 : vector<1x16x8xf32> to vector<16x8xf32>
    %cst_182 = arith.constant dense<0.000000e+00> : vector<128x8xf32>
    %175 = tpu.matmul %172, %174, %cst_182 {dimension_numbers = #tpu.dot_dimension_numbers<[1], [0], [0], [1], [0, 0, 1, 1], [], []>} : vector<128x16xf32>, vector<16x8xf32>, vector<128x8xf32> -> vector<128x8xf32>
    %176 = arith.addf %169, %175 : vector<128x8xf32>
    %c10_183 = arith.constant 10 : index
    %c0_184 = arith.constant 0 : index
    %c0_185 = arith.constant 0 : index
    %177 = vector.load %arg2[%c10_183, %c0_184, %c0_185] : memref<16x128x128xf32, #tpu.memory_space<vmem>>, vector<1x128x128xf32>
    %178 = vector.shape_cast %177 : vector<1x128x128xf32> to vector<128x128xf32>
    %cst_186 = arith.constant dense<0.000000e+00> : vector<128x16xf32>
    %179 = tpu.matmul %178, %135, %cst_186 {dimension_numbers = #tpu.dot_dimension_numbers<[1], [0], [0], [1], [0, 0, 1, 1], [], []>} : vector<128x128xf32>, vector<128x16xf32>, vector<128x16xf32> -> vector<128x16xf32>
    %c6_187 = arith.constant 6 : index
    %c0_188 = arith.constant 0 : index
    %c0_189 = arith.constant 0 : index
    %180 = vector.load %arg9[%c6_187, %c0_188, %c0_189] : memref<9x16x8xf32, #tpu.memory_space<vmem>>, vector<1x16x8xf32>
    %181 = vector.shape_cast %180 : vector<1x16x8xf32> to vector<16x8xf32>
    %cst_190 = arith.constant dense<0.000000e+00> : vector<128x8xf32>
    %182 = tpu.matmul %179, %181, %cst_190 {dimension_numbers = #tpu.dot_dimension_numbers<[1], [0], [0], [1], [0, 0, 1, 1], [], []>} : vector<128x16xf32>, vector<16x8xf32>, vector<128x8xf32> -> vector<128x8xf32>
    %183 = arith.addf %176, %182 : vector<128x8xf32>
    %c11_191 = arith.constant 11 : index
    %c0_192 = arith.constant 0 : index
    %c0_193 = arith.constant 0 : index
    %184 = vector.load %arg2[%c11_191, %c0_192, %c0_193] : memref<16x128x128xf32, #tpu.memory_space<vmem>>, vector<1x128x128xf32>
    %185 = vector.shape_cast %184 : vector<1x128x128xf32> to vector<128x128xf32>
    %cst_194 = arith.constant dense<0.000000e+00> : vector<128x16xf32>
    %186 = tpu.matmul %185, %135, %cst_194 {dimension_numbers = #tpu.dot_dimension_numbers<[1], [0], [0], [1], [0, 0, 1, 1], [], []>} : vector<128x128xf32>, vector<128x16xf32>, vector<128x16xf32> -> vector<128x16xf32>
    %c7_195 = arith.constant 7 : index
    %c0_196 = arith.constant 0 : index
    %c0_197 = arith.constant 0 : index
    %187 = vector.load %arg9[%c7_195, %c0_196, %c0_197] : memref<9x16x8xf32, #tpu.memory_space<vmem>>, vector<1x16x8xf32>
    %188 = vector.shape_cast %187 : vector<1x16x8xf32> to vector<16x8xf32>
    %cst_198 = arith.constant dense<0.000000e+00> : vector<128x8xf32>
    %189 = tpu.matmul %186, %188, %cst_198 {dimension_numbers = #tpu.dot_dimension_numbers<[1], [0], [0], [1], [0, 0, 1, 1], [], []>} : vector<128x16xf32>, vector<16x8xf32>, vector<128x8xf32> -> vector<128x8xf32>
    %190 = arith.addf %183, %189 : vector<128x8xf32>
    %c12_199 = arith.constant 12 : index
    %c0_200 = arith.constant 0 : index
    %c0_201 = arith.constant 0 : index
    %191 = vector.load %arg2[%c12_199, %c0_200, %c0_201] : memref<16x128x128xf32, #tpu.memory_space<vmem>>, vector<1x128x128xf32>
    %192 = vector.shape_cast %191 : vector<1x128x128xf32> to vector<128x128xf32>
    %cst_202 = arith.constant dense<0.000000e+00> : vector<128x16xf32>
    %193 = tpu.matmul %192, %135, %cst_202 {dimension_numbers = #tpu.dot_dimension_numbers<[1], [0], [0], [1], [0, 0, 1, 1], [], []>} : vector<128x128xf32>, vector<128x16xf32>, vector<128x16xf32> -> vector<128x16xf32>
    %c8_203 = arith.constant 8 : index
    %c0_204 = arith.constant 0 : index
    %c0_205 = arith.constant 0 : index
    %194 = vector.load %arg9[%c8_203, %c0_204, %c0_205] : memref<9x16x8xf32, #tpu.memory_space<vmem>>, vector<1x16x8xf32>
    %195 = vector.shape_cast %194 : vector<1x16x8xf32> to vector<16x8xf32>
    %cst_206 = arith.constant dense<0.000000e+00> : vector<128x8xf32>
    %196 = tpu.matmul %193, %195, %cst_206 {dimension_numbers = #tpu.dot_dimension_numbers<[1], [0], [0], [1], [0, 0, 1, 1], [], []>} : vector<128x16xf32>, vector<16x8xf32>, vector<128x8xf32> -> vector<128x8xf32>
    %197 = arith.addf %190, %196 : vector<128x8xf32>
    %cst_207 = arith.constant 0.000000e+00 : f32
    %198 = vector.broadcast %cst_207 : f32 to vector<128x8xf32>
    %199 = arith.maximumf %197, %198 : vector<128x8xf32>
    %c0_208 = arith.constant 0 : index
    %c0_209 = arith.constant 0 : index
    %200 = vector.load %arg11[%c0_208, %c0_209] : memref<8x32xf32, #tpu.memory_space<vmem>>, vector<8x32xf32>
    %cst_210 = arith.constant dense<0.000000e+00> : vector<128x32xf32>
    %201 = tpu.matmul %199, %200, %cst_210 {dimension_numbers = #tpu.dot_dimension_numbers<[1], [0], [0], [1], [0, 0, 1, 1], [], []>} : vector<128x8xf32>, vector<8x32xf32>, vector<128x32xf32> -> vector<128x32xf32>
    %c0_211 = arith.constant 0 : index
    %c0_212 = arith.constant 0 : index
    %202 = vector.load %arg12[%c0_211, %c0_212] : memref<1x32xf32, #tpu.memory_space<vmem>>, vector<1x32xf32>
    %203 = vector.broadcast %202 : vector<1x32xf32> to vector<128x32xf32>
    %204 = arith.addf %201, %203 : vector<128x32xf32>
    %205 = arith.mulf %71, %204 : vector<128x32xf32>
    %c0_213 = arith.constant 0 : index
    %c0_214 = arith.constant 0 : index
    %206 = vector.load %arg13[%c0_213, %c0_214] : memref<8x128xf32, #tpu.memory_space<vmem>>, vector<8x128xf32>
    %cst_215 = arith.constant dense<0.000000e+00> : vector<128x128xf32>
    %207 = tpu.matmul %199, %206, %cst_215 {dimension_numbers = #tpu.dot_dimension_numbers<[1], [0], [0], [1], [0, 0, 1, 1], [], []>} : vector<128x8xf32>, vector<8x128xf32>, vector<128x128xf32> -> vector<128x128xf32>
    %c0_216 = arith.constant 0 : index
    %c0_217 = arith.constant 0 : index
    %c0_218 = arith.constant 0 : index
    %208 = vector.load %arg2[%c0_216, %c0_217, %c0_218] : memref<16x128x128xf32, #tpu.memory_space<vmem>>, vector<1x128x128xf32>
    %209 = vector.shape_cast %208 : vector<1x128x128xf32> to vector<128x128xf32>
    %cst_219 = arith.constant dense<0.000000e+00> : vector<128x32xf32>
    %210 = tpu.matmul %209, %205, %cst_219 {dimension_numbers = #tpu.dot_dimension_numbers<[1], [0], [0], [1], [0, 0, 1, 1], [], []>} : vector<128x128xf32>, vector<128x32xf32>, vector<128x32xf32> -> vector<128x32xf32>
    %c0_220 = arith.constant 0 : index
    %c0_221 = arith.constant 0 : index
    %c0_222 = arith.constant 0 : index
    %211 = vector.load %arg14[%c0_220, %c0_221, %c0_222] : memref<9x32x128xf32, #tpu.memory_space<vmem>>, vector<1x32x128xf32>
    %212 = vector.shape_cast %211 : vector<1x32x128xf32> to vector<32x128xf32>
    %cst_223 = arith.constant dense<0.000000e+00> : vector<128x128xf32>
    %213 = tpu.matmul %210, %212, %cst_223 {dimension_numbers = #tpu.dot_dimension_numbers<[1], [0], [0], [1], [0, 0, 1, 1], [], []>} : vector<128x32xf32>, vector<32x128xf32>, vector<128x128xf32> -> vector<128x128xf32>
    %214 = arith.addf %207, %213 : vector<128x128xf32>
    %c1_224 = arith.constant 1 : index
    %c0_225 = arith.constant 0 : index
    %c0_226 = arith.constant 0 : index
    %215 = vector.load %arg2[%c1_224, %c0_225, %c0_226] : memref<16x128x128xf32, #tpu.memory_space<vmem>>, vector<1x128x128xf32>
    %216 = vector.shape_cast %215 : vector<1x128x128xf32> to vector<128x128xf32>
    %cst_227 = arith.constant dense<0.000000e+00> : vector<128x32xf32>
    %217 = tpu.matmul %216, %205, %cst_227 {dimension_numbers = #tpu.dot_dimension_numbers<[1], [0], [0], [1], [0, 0, 1, 1], [], []>} : vector<128x128xf32>, vector<128x32xf32>, vector<128x32xf32> -> vector<128x32xf32>
    %c1_228 = arith.constant 1 : index
    %c0_229 = arith.constant 0 : index
    %c0_230 = arith.constant 0 : index
    %218 = vector.load %arg14[%c1_228, %c0_229, %c0_230] : memref<9x32x128xf32, #tpu.memory_space<vmem>>, vector<1x32x128xf32>
    %219 = vector.shape_cast %218 : vector<1x32x128xf32> to vector<32x128xf32>
    %cst_231 = arith.constant dense<0.000000e+00> : vector<128x128xf32>
    %220 = tpu.matmul %217, %219, %cst_231 {dimension_numbers = #tpu.dot_dimension_numbers<[1], [0], [0], [1], [0, 0, 1, 1], [], []>} : vector<128x32xf32>, vector<32x128xf32>, vector<128x128xf32> -> vector<128x128xf32>
    %221 = arith.addf %214, %220 : vector<128x128xf32>
    %c2_232 = arith.constant 2 : index
    %c0_233 = arith.constant 0 : index
    %c0_234 = arith.constant 0 : index
    %222 = vector.load %arg2[%c2_232, %c0_233, %c0_234] : memref<16x128x128xf32, #tpu.memory_space<vmem>>, vector<1x128x128xf32>
    %223 = vector.shape_cast %222 : vector<1x128x128xf32> to vector<128x128xf32>
    %cst_235 = arith.constant dense<0.000000e+00> : vector<128x32xf32>
    %224 = tpu.matmul %223, %205, %cst_235 {dimension_numbers = #tpu.dot_dimension_numbers<[1], [0], [0], [1], [0, 0, 1, 1], [], []>} : vector<128x128xf32>, vector<128x32xf32>, vector<128x32xf32> -> vector<128x32xf32>
    %c2_236 = arith.constant 2 : index
    %c0_237 = arith.constant 0 : index
    %c0_238 = arith.constant 0 : index
    %225 = vector.load %arg14[%c2_236, %c0_237, %c0_238] : memref<9x32x128xf32, #tpu.memory_space<vmem>>, vector<1x32x128xf32>
    %226 = vector.shape_cast %225 : vector<1x32x128xf32> to vector<32x128xf32>
    %cst_239 = arith.constant dense<0.000000e+00> : vector<128x128xf32>
    %227 = tpu.matmul %224, %226, %cst_239 {dimension_numbers = #tpu.dot_dimension_numbers<[1], [0], [0], [1], [0, 0, 1, 1], [], []>} : vector<128x32xf32>, vector<32x128xf32>, vector<128x128xf32> -> vector<128x128xf32>
    %228 = arith.addf %221, %227 : vector<128x128xf32>
    %c6_240 = arith.constant 6 : index
    %c0_241 = arith.constant 0 : index
    %c0_242 = arith.constant 0 : index
    %229 = vector.load %arg2[%c6_240, %c0_241, %c0_242] : memref<16x128x128xf32, #tpu.memory_space<vmem>>, vector<1x128x128xf32>
    %230 = vector.shape_cast %229 : vector<1x128x128xf32> to vector<128x128xf32>
    %cst_243 = arith.constant dense<0.000000e+00> : vector<128x32xf32>
    %231 = tpu.matmul %230, %205, %cst_243 {dimension_numbers = #tpu.dot_dimension_numbers<[1], [0], [0], [1], [0, 0, 1, 1], [], []>} : vector<128x128xf32>, vector<128x32xf32>, vector<128x32xf32> -> vector<128x32xf32>
    %c3_244 = arith.constant 3 : index
    %c0_245 = arith.constant 0 : index
    %c0_246 = arith.constant 0 : index
    %232 = vector.load %arg14[%c3_244, %c0_245, %c0_246] : memref<9x32x128xf32, #tpu.memory_space<vmem>>, vector<1x32x128xf32>
    %233 = vector.shape_cast %232 : vector<1x32x128xf32> to vector<32x128xf32>
    %cst_247 = arith.constant dense<0.000000e+00> : vector<128x128xf32>
    %234 = tpu.matmul %231, %233, %cst_247 {dimension_numbers = #tpu.dot_dimension_numbers<[1], [0], [0], [1], [0, 0, 1, 1], [], []>} : vector<128x32xf32>, vector<32x128xf32>, vector<128x128xf32> -> vector<128x128xf32>
    %235 = arith.addf %228, %234 : vector<128x128xf32>
    %c4_248 = arith.constant 4 : index
    %c0_249 = arith.constant 0 : index
    %c0_250 = arith.constant 0 : index
    %236 = vector.load %arg14[%c4_248, %c0_249, %c0_250] : memref<9x32x128xf32, #tpu.memory_space<vmem>>, vector<1x32x128xf32>
    %237 = vector.shape_cast %236 : vector<1x32x128xf32> to vector<32x128xf32>
    %cst_251 = arith.constant dense<0.000000e+00> : vector<128x128xf32>
    %238 = tpu.matmul %205, %237, %cst_251 {dimension_numbers = #tpu.dot_dimension_numbers<[1], [0], [0], [1], [0, 0, 1, 1], [], []>} : vector<128x32xf32>, vector<32x128xf32>, vector<128x128xf32> -> vector<128x128xf32>
    %239 = arith.addf %235, %238 : vector<128x128xf32>
    %c9 = arith.constant 9 : index
    %c0_252 = arith.constant 0 : index
    %c0_253 = arith.constant 0 : index
    %240 = vector.load %arg2[%c9, %c0_252, %c0_253] : memref<16x128x128xf32, #tpu.memory_space<vmem>>, vector<1x128x128xf32>
    %241 = vector.shape_cast %240 : vector<1x128x128xf32> to vector<128x128xf32>
    %cst_254 = arith.constant dense<0.000000e+00> : vector<128x32xf32>
    %242 = tpu.matmul %241, %205, %cst_254 {dimension_numbers = #tpu.dot_dimension_numbers<[1], [0], [0], [1], [0, 0, 1, 1], [], []>} : vector<128x128xf32>, vector<128x32xf32>, vector<128x32xf32> -> vector<128x32xf32>
    %c5_255 = arith.constant 5 : index
    %c0_256 = arith.constant 0 : index
    %c0_257 = arith.constant 0 : index
    %243 = vector.load %arg14[%c5_255, %c0_256, %c0_257] : memref<9x32x128xf32, #tpu.memory_space<vmem>>, vector<1x32x128xf32>
    %244 = vector.shape_cast %243 : vector<1x32x128xf32> to vector<32x128xf32>
    %cst_258 = arith.constant dense<0.000000e+00> : vector<128x128xf32>
    %245 = tpu.matmul %242, %244, %cst_258 {dimension_numbers = #tpu.dot_dimension_numbers<[1], [0], [0], [1], [0, 0, 1, 1], [], []>} : vector<128x32xf32>, vector<32x128xf32>, vector<128x128xf32> -> vector<128x128xf32>
    %246 = arith.addf %239, %245 : vector<128x128xf32>
    %c13 = arith.constant 13 : index
    %c0_259 = arith.constant 0 : index
    %c0_260 = arith.constant 0 : index
    %247 = vector.load %arg2[%c13, %c0_259, %c0_260] : memref<16x128x128xf32, #tpu.memory_space<vmem>>, vector<1x128x128xf32>
    %248 = vector.shape_cast %247 : vector<1x128x128xf32> to vector<128x128xf32>
    %cst_261 = arith.constant dense<0.000000e+00> : vector<128x32xf32>
    %249 = tpu.matmul %248, %205, %cst_261 {dimension_numbers = #tpu.dot_dimension_numbers<[1], [0], [0], [1], [0, 0, 1, 1], [], []>} : vector<128x128xf32>, vector<128x32xf32>, vector<128x32xf32> -> vector<128x32xf32>
    %c6_262 = arith.constant 6 : index
    %c0_263 = arith.constant 0 : index
    %c0_264 = arith.constant 0 : index
    %250 = vector.load %arg14[%c6_262, %c0_263, %c0_264] : memref<9x32x128xf32, #tpu.memory_space<vmem>>, vector<1x32x128xf32>
    %251 = vector.shape_cast %250 : vector<1x32x128xf32> to vector<32x128xf32>
    %cst_265 = arith.constant dense<0.000000e+00> : vector<128x128xf32>
    %252 = tpu.matmul %249, %251, %cst_265 {dimension_numbers = #tpu.dot_dimension_numbers<[1], [0], [0], [1], [0, 0, 1, 1], [], []>} : vector<128x32xf32>, vector<32x128xf32>, vector<128x128xf32> -> vector<128x128xf32>
    %253 = arith.addf %246, %252 : vector<128x128xf32>
    %c14 = arith.constant 14 : index
    %c0_266 = arith.constant 0 : index
    %c0_267 = arith.constant 0 : index
    %254 = vector.load %arg2[%c14, %c0_266, %c0_267] : memref<16x128x128xf32, #tpu.memory_space<vmem>>, vector<1x128x128xf32>
    %255 = vector.shape_cast %254 : vector<1x128x128xf32> to vector<128x128xf32>
    %cst_268 = arith.constant dense<0.000000e+00> : vector<128x32xf32>
    %256 = tpu.matmul %255, %205, %cst_268 {dimension_numbers = #tpu.dot_dimension_numbers<[1], [0], [0], [1], [0, 0, 1, 1], [], []>} : vector<128x128xf32>, vector<128x32xf32>, vector<128x32xf32> -> vector<128x32xf32>
    %c7_269 = arith.constant 7 : index
    %c0_270 = arith.constant 0 : index
    %c0_271 = arith.constant 0 : index
    %257 = vector.load %arg14[%c7_269, %c0_270, %c0_271] : memref<9x32x128xf32, #tpu.memory_space<vmem>>, vector<1x32x128xf32>
    %258 = vector.shape_cast %257 : vector<1x32x128xf32> to vector<32x128xf32>
    %cst_272 = arith.constant dense<0.000000e+00> : vector<128x128xf32>
    %259 = tpu.matmul %256, %258, %cst_272 {dimension_numbers = #tpu.dot_dimension_numbers<[1], [0], [0], [1], [0, 0, 1, 1], [], []>} : vector<128x32xf32>, vector<32x128xf32>, vector<128x128xf32> -> vector<128x128xf32>
    %260 = arith.addf %253, %259 : vector<128x128xf32>
    %c15 = arith.constant 15 : index
    %c0_273 = arith.constant 0 : index
    %c0_274 = arith.constant 0 : index
    %261 = vector.load %arg2[%c15, %c0_273, %c0_274] : memref<16x128x128xf32, #tpu.memory_space<vmem>>, vector<1x128x128xf32>
    %262 = vector.shape_cast %261 : vector<1x128x128xf32> to vector<128x128xf32>
    %cst_275 = arith.constant dense<0.000000e+00> : vector<128x32xf32>
    %263 = tpu.matmul %262, %205, %cst_275 {dimension_numbers = #tpu.dot_dimension_numbers<[1], [0], [0], [1], [0, 0, 1, 1], [], []>} : vector<128x128xf32>, vector<128x32xf32>, vector<128x32xf32> -> vector<128x32xf32>
    %c8_276 = arith.constant 8 : index
    %c0_277 = arith.constant 0 : index
    %c0_278 = arith.constant 0 : index
    %264 = vector.load %arg14[%c8_276, %c0_277, %c0_278] : memref<9x32x128xf32, #tpu.memory_space<vmem>>, vector<1x32x128xf32>
    %265 = vector.shape_cast %264 : vector<1x32x128xf32> to vector<32x128xf32>
    %cst_279 = arith.constant dense<0.000000e+00> : vector<128x128xf32>
    %266 = tpu.matmul %263, %265, %cst_279 {dimension_numbers = #tpu.dot_dimension_numbers<[1], [0], [0], [1], [0, 0, 1, 1], [], []>} : vector<128x32xf32>, vector<32x128xf32>, vector<128x128xf32> -> vector<128x128xf32>
    %267 = arith.addf %260, %266 : vector<128x128xf32>
    %c0_280 = arith.constant 0 : index
    %c0_281 = arith.constant 0 : index
    %268 = vector.load %arg15[%c0_280, %c0_281] : memref<1x128xf32, #tpu.memory_space<vmem>>, vector<1x128xf32>
    %269 = vector.broadcast %268 : vector<1x128xf32> to vector<128x128xf32>
    %270 = arith.addf %267, %269 : vector<128x128xf32>
    %c0_282 = arith.constant 0 : index
    %c0_283 = arith.constant 0 : index
    %271 = vector.load %arg16[%c0_282, %c0_283] : memref<128x128xf32, #tpu.memory_space<vmem>>, vector<128x128xf32>
    tpu.vector_store %arg16[%c0_282, %c0_283], %270 {strides = array<i32>} : memref<128x128xf32, #tpu.memory_space<vmem>>, vector<128x128xf32>,
    return
  }
  func.func @transform_0(%arg0: i32) -> (i32, i32) {
    %c0_i32 = arith.constant 0 : i32
    %c0_i32_0 = arith.constant 0 : i32
    return %arg0, %c0_i32 : i32, i32
  }
  func.func @transform_1(%arg0: i32) -> (i32, i32, i32) {
    %c0_i32 = arith.constant 0 : i32
    %c0_i32_0 = arith.constant 0 : i32
    %c0_i32_1 = arith.constant 0 : i32
    %c0_i32_2 = arith.constant 0 : i32
    return %c0_i32, %c0_i32_0, %c0_i32_1 : i32, i32, i32
  }
  func.func @transform_2(%arg0: i32) -> (i32, i32) {
    %c0_i32 = arith.constant 0 : i32
    %c0_i32_0 = arith.constant 0 : i32
    %c0_i32_1 = arith.constant 0 : i32
    return %c0_i32, %c0_i32_0 : i32, i32
  }
  func.func @transform_3(%arg0: i32) -> (i32, i32) {
    %c0_i32 = arith.constant 0 : i32
    %c0_i32_0 = arith.constant 0 : i32
    %c0_i32_1 = arith.constant 0 : i32
    return %c0_i32, %c0_i32_0 : i32, i32
  }
  func.func @transform_4(%arg0: i32) -> (i32, i32, i32) {
    %c0_i32 = arith.constant 0 : i32
    %c0_i32_0 = arith.constant 0 : i32
    %c0_i32_1 = arith.constant 0 : i32
    %c0_i32_2 = arith.constant 0 : i32
    return %c0_i32, %c0_i32_0, %c0_i32_1 : i32, i32, i32
  }
  func.func @transform_5(%arg0: i32) -> (i32, i32) {
    %c0_i32 = arith.constant 0 : i32
    %c0_i32_0 = arith.constant 0 : i32
    %c0_i32_1 = arith.constant 0 : i32
    return %c0_i32, %c0_i32_0 : i32, i32
  }
  func.func @transform_6(%arg0: i32) -> (i32, i32, i32) {
    %c0_i32 = arith.constant 0 : i32
    %c0_i32_0 = arith.constant 0 : i32
    %c0_i32_1 = arith.constant 0 : i32
    %c0_i32_2 = arith.constant 0 : i32
    return %c0_i32, %c0_i32_0, %c0_i32_1 : i32, i32, i32
  }
  func.func @transform_7(%arg0: i32) -> (i32, i32) {
    %c0_i32 = arith.constant 0 : i32
    %c0_i32_0 = arith.constant 0 : i32
    %c0_i32_1 = arith.constant 0 : i32
    return %c0_i32, %c0_i32_0 : i32, i32
  }
  func.func @transform_8(%arg0: i32) -> (i32, i32, i32) {
    %c0_i32 = arith.constant 0 : i32
    %c0_i32_0 = arith.constant 0 : i32
    %c0_i32_1 = arith.constant 0 : i32
    %c0_i32_2 = arith.constant 0 : i32
    return %c0_i32, %c0_i32_0, %c0_i32_1 : i32, i32, i32
  }
  func.func @transform_9(%arg0: i32) -> (i32, i32) {
    %c0_i32 = arith.constant 0 : i32
    %c0_i32_0 = arith.constant 0 : i32
    %c0_i32_1 = arith.constant 0 : i32
    return %c0_i32, %c0_i32_0 : i32, i32
  }
  func.func @transform_10(%arg0: i32) -> (i32, i32) {
    %c0_i32 = arith.constant 0 : i32
    %c0_i32_0 = arith.constant 0 : i32
    %c0_i32_1 = arith.constant 0 : i32
    return %c0_i32, %c0_i32_0 : i32, i32
  }
  func.func @transform_11(%arg0: i32) -> (i32, i32) {
    %c0_i32 = arith.constant 0 : i32
    %c0_i32_0 = arith.constant 0 : i32
    %c0_i32_1 = arith.constant 0 : i32
    return %c0_i32, %c0_i32_0 : i32, i32
  }
  func.func @transform_12(%arg0: i32) -> (i32, i32) {
    %c0_i32 = arith.constant 0 : i32
    %c0_i32_0 = arith.constant 0 : i32
    %c0_i32_1 = arith.constant 0 : i32
    return %c0_i32, %c0_i32_0 : i32, i32
  }
  func.func @transform_13(%arg0: i32) -> (i32, i32, i32) {
    %c0_i32 = arith.constant 0 : i32
    %c0_i32_0 = arith.constant 0 : i32
    %c0_i32_1 = arith.constant 0 : i32
    %c0_i32_2 = arith.constant 0 : i32
    return %c0_i32, %c0_i32_0, %c0_i32_1 : i32, i32, i32
  }
  func.func @transform_14(%arg0: i32) -> (i32, i32) {
    %c0_i32 = arith.constant 0 : i32
    %c0_i32_0 = arith.constant 0 : i32
    %c0_i32_1 = arith.constant 0 : i32
    return %c0_i32, %c0_i32_0 : i32, i32
  }
  func.func @transform_15(%arg0: i32) -> (i32, i32) {
    %c0_i32 = arith.constant 0 : i32
    %c0_i32_0 = arith.constant 0 : i32
    return %arg0, %c0_i32 : i32, i32
  }
}

</mosaic_0001>

<llo_original>
// kernel: dada_forward.1
$region0: #{dada_forward.1}
  #allocation0 [shape = 'u32[]', space=smem, size = 0x4, offset = 0x4, fixed_abs, tag = 'smem constant byte address 0x4 - core index']
  #allocation1 [shape = 'u32[144,128]{1,0:T(1,128)}', space=vmem, size = 0x12000, scoped, tag = 'internal scratch']
  %s0 = inlined_call_operand.vmem [shape: f32[128,27], index: 0, kind: input, shape index: {}]
  %s1 = inlined_call_operand.vmem [shape: f32[16,128,128], index: 1, kind: input, shape index: {}]
  %s2 = inlined_call_operand.vmem [shape: f32[27,32], index: 2, kind: input, shape index: {}]
  %s3 = inlined_call_operand.vmem [shape: f32[1,32], index: 3, kind: input, shape index: {}]
  %s4 = inlined_call_operand.vmem [shape: f32[9,32,32], index: 4, kind: input, shape index: {}]
  %s5 = inlined_call_operand.vmem [shape: f32[1,32], index: 5, kind: input, shape index: {}]
  %s6 = inlined_call_operand.vmem [shape: f32[9,32,16], index: 6, kind: input, shape index: {}]
  %s7 = inlined_call_operand.vmem [shape: f32[1,16], index: 7, kind: input, shape index: {}]
  %s8 = inlined_call_operand.vmem [shape: f32[9,16,8], index: 8, kind: input, shape index: {}]
  %s9 = inlined_call_operand.vmem [shape: f32[1,8], index: 9, kind: input, shape index: {}]
  %s10 = inlined_call_operand.vmem [shape: f32[8,32], index: 10, kind: input, shape index: {}]
  %s11 = inlined_call_operand.vmem [shape: f32[1,32], index: 11, kind: input, shape index: {}]
  %s12 = inlined_call_operand.vmem [shape: f32[8,128], index: 12, kind: input, shape index: {}]
  %s13 = inlined_call_operand.vmem [shape: f32[9,32,128], index: 13, kind: input, shape index: {}]
  %s14 = inlined_call_operand.vmem [shape: f32[1,128], index: 14, kind: input, shape index: {}]
  %s15 = inlined_call_operand.vmem [shape: f32[128,128], index: 15, kind: output, shape index: {}]
  %s16 = sld [smem:[#allocation0]]
  $region70: #{dada_forward.1} parent=0
    _
  %s18 = ssub.s32 1, %s16
  %s19 = scalar_select 0, %s18, %s16
  // Predicated region
  $region2: #{dada_forward.1} parent=0 // pred_check
    _
  $region3: #{dada_forward.1} parent=0 // pred_check_branch
    %21 = sbr.rel (0) target = $region5
  $region4: #{dada_forward.1} parent=0 // pred_region
    _
  $region5: #{dada_forward.1} parent=0 // pred_fallthru
    _
  // Predicated region
  $region6: #{dada_forward.1} parent=0 // pred_check
    _
  $region7: #{dada_forward.1} parent=0 // pred_check_branch
    %23 = sbr.rel (0) target = $region9
  $region8: #{dada_forward.1} parent=0 // pred_region
    _
  $region9: #{dada_forward.1} parent=0 // pred_fallthru
    _
  // Predicated region
  $region10: #{dada_forward.1} parent=0 // pred_check
    _
  $region11: #{dada_forward.1} parent=0 // pred_check_branch
    %25 = sbr.rel (0) target = $region13
  $region12: #{dada_forward.1} parent=0 // pred_region
    _
  $region13: #{dada_forward.1} parent=0 // pred_fallthru
    _
  // Predicated region
  $region14: #{dada_forward.1} parent=0 // pred_check
    _
  $region15: #{dada_forward.1} parent=0 // pred_check_branch
    %27 = sbr.rel (0) target = $region17
  $region16: #{dada_forward.1} parent=0 // pred_region
    _
  $region17: #{dada_forward.1} parent=0 // pred_fallthru
    _
  // Predicated region
  $region18: #{dada_forward.1} parent=0 // pred_check
    _
  $region19: #{dada_forward.1} parent=0 // pred_check_branch
    %29 = sbr.rel (0) target = $region21
  $region20: #{dada_forward.1} parent=0 // pred_region
    _
  $region21: #{dada_forward.1} parent=0 // pred_fallthru
    _
  // Predicated region
  $region22: #{dada_forward.1} parent=0 // pred_check
    _
  $region23: #{dada_forward.1} parent=0 // pred_check_branch
    %31 = sbr.rel (0) target = $region25
  $region24: #{dada_forward.1} parent=0 // pred_region
    _
  $region25: #{dada_forward.1} parent=0 // pred_fallthru
    _
  // Predicated region
  $region26: #{dada_forward.1} parent=0 // pred_check
    _
  $region27: #{dada_forward.1} parent=0 // pred_check_branch
    %33 = sbr.rel (0) target = $region29
  $region28: #{dada_forward.1} parent=0 // pred_region
    _
  $region29: #{dada_forward.1} parent=0 // pred_fallthru
    _
  // Predicated region
  $region30: #{dada_forward.1} parent=0 // pred_check
    _
  $region31: #{dada_forward.1} parent=0 // pred_check_branch
    %35 = sbr.rel (0) target = $region33
  $region32: #{dada_forward.1} parent=0 // pred_region
    _
  $region33: #{dada_forward.1} parent=0 // pred_fallthru
    _
  // Predicated region
  $region34: #{dada_forward.1} parent=0 // pred_check
    _
  $region35: #{dada_forward.1} parent=0 // pred_check_branch
    %37 = sbr.rel (0) target = $region37
  $region36: #{dada_forward.1} parent=0 // pred_region
    _
  $region37: #{dada_forward.1} parent=0 // pred_fallthru
    _
  // Predicated region
  $region38: #{dada_forward.1} parent=0 // pred_check
    _
  $region39: #{dada_forward.1} parent=0 // pred_check_branch
    %39 = sbr.rel (0) target = $region41
  $region40: #{dada_forward.1} parent=0 // pred_region
    _
  $region41: #{dada_forward.1} parent=0 // pred_fallthru
    _
  // Predicated region
  $region42: #{dada_forward.1} parent=0 // pred_check
    _
  $region43: #{dada_forward.1} parent=0 // pred_check_branch
    %41 = sbr.rel (0) target = $region45
  $region44: #{dada_forward.1} parent=0 // pred_region
    _
  $region45: #{dada_forward.1} parent=0 // pred_fallthru
    _
  // Predicated region
  $region46: #{dada_forward.1} parent=0 // pred_check
    _
  $region47: #{dada_forward.1} parent=0 // pred_check_branch
    %43 = sbr.rel (0) target = $region49
  $region48: #{dada_forward.1} parent=0 // pred_region
    _
  $region49: #{dada_forward.1} parent=0 // pred_fallthru
    _
  // Predicated region
  $region50: #{dada_forward.1} parent=0 // pred_check
    _
  $region51: #{dada_forward.1} parent=0 // pred_check_branch
    %45 = sbr.rel (0) target = $region53
  $region52: #{dada_forward.1} parent=0 // pred_region
    _
  $region53: #{dada_forward.1} parent=0 // pred_fallthru
    _
  // Predicated region
  $region54: #{dada_forward.1} parent=0 // pred_check
    _
  $region55: #{dada_forward.1} parent=0 // pred_check_branch
    %47 = sbr.rel (0) target = $region57
  $region56: #{dada_forward.1} parent=0 // pred_region
    _
  $region57: #{dada_forward.1} parent=0 // pred_fallthru
    _
  // Predicated region
  $region58: #{dada_forward.1} parent=0 // pred_check
    _
  $region59: #{dada_forward.1} parent=0 // pred_check_branch
    %49 = sbr.rel (0) target = $region61
  $region60: #{dada_forward.1} parent=0 // pred_region
    _
  $region61: #{dada_forward.1} parent=0 // pred_fallthru
    _
  %v50 = vld [vmem:[%s0] sm:$0xff]
  %v51 = vld [vmem:[%s0 + $0x8] sm:$0xff]
  %v52 = vld [vmem:[%s0 + $0x10] sm:$0xff]
  %v53 = vld [vmem:[%s0 + $0x18] sm:$0xff]
  %v54 = vld [vmem:[%s0 + $0x20] sm:$0xff]
  %v55 = vld [vmem:[%s0 + $0x28] sm:$0xff]
  %v56 = vld [vmem:[%s0 + $0x30] sm:$0xff]
  %v57 = vld [vmem:[%s0 + $0x38] sm:$0xff]
  %v58 = vld [vmem:[%s0 + $0x40] sm:$0xff]
  %v59 = vld [vmem:[%s0 + $0x48] sm:$0xff]
  %v60 = vld [vmem:[%s0 + $0x50] sm:$0xff]
  %v61 = vld [vmem:[%s0 + $0x58] sm:$0xff]
  %v62 = vld [vmem:[%s0 + $0x60] sm:$0xff]
  %v63 = vld [vmem:[%s0 + $0x68] sm:$0xff]
  %v64 = vld [vmem:[%s0 + $0x70] sm:$0xff]
  %v65 = vld [vmem:[%s0 + $0x78] sm:$0xff]
  %v66 = vld [vmem:[%s2] sm:$0xff]
  %v67 = vld [vmem:[%s2 + $0x8] sm:$0xff]
  %v68 = vld [vmem:[%s2 + $0x10] sm:$0xff]
  %v69 = vld [vmem:[%s2 + $0x18] sm:$0x7]
  %v70 = vld [vmem:[%s3] sm:$0x1]
  %v72 = vlaneseq
  %v73 = vshrl.u32 %v72, 7
  %v74 = vsub.s32 0, %v73
  %v75 = vrot.slane %v70, %v74
  %vm77 = vcmask 220160
  %v79 = vsel %vm77, %v50, 0
  %v82 = vsel %vm77, %v51, 0
  %v85 = vsel %vm77, %v52, 0
  %v88 = vsel %vm77, %v53, 0
  %v91 = vsel %vm77, %v54, 0
  %v94 = vsel %vm77, %v55, 0
  %v97 = vsel %vm77, %v56, 0
  %v100 = vsel %vm77, %v57, 0
  %v103 = vsel %vm77, %v58, 0
  %v106 = vsel %vm77, %v59, 0
  %v109 = vsel %vm77, %v60, 0
  %v112 = vsel %vm77, %v61, 0
  %v115 = vsel %vm77, %v62, 0
  %v118 = vsel %vm77, %v63, 0
  %v121 = vsel %vm77, %v64, 0
  %v124 = vsel %vm77, %v65, 0
  %vm126 = vcmask 1042432
  %v128 = vsel %vm126, %v69, 0
  %130 = vmatprep.subr.mxu0 0.0
  %131 = vmatpush1.msra.mxu0 0.0
  %132 = vmatprep.subr.mxu0 0.0
  %133 = vmatpush1.msra.mxu0 0.0
  %134 = vmatprep.subr.mxu0 0.0
  %135 = vmatpush1.msra.mxu0 0.0
  %136 = vmatprep.subr.mxu0 0.0
  %137 = vmatpush1.msra.mxu0 0.0
  %138 = vmatprep.subr.mxu0 0.0
  %139 = vmatpush1.msra.mxu0 0.0
  %140 = vmatprep.subr.mxu0 0.0
  %141 = vmatpush1.msra.mxu0 0.0
  %142 = vmatprep.subr.mxu0 0.0
  %143 = vmatpush1.msra.mxu0 0.0
  %144 = vmatprep.subr.mxu0 0.0
  %145 = vmatpush1.msra.mxu0 0.0
  %146 = vmatprep.subr.mxu0 0.0
  %147 = vmatpush1.msra.mxu0 0.0
  %148 = vmatprep.subr.mxu0 0.0
  %149 = vmatpush1.msra.mxu0 0.0
  %150 = vmatprep.subr.mxu0 0.0
  %151 = vmatpush1.msra.mxu0 0.0
  %152 = vmatprep.subr.mxu0 0.0
  %153 = vmatpush1.msra.mxu0 0.0
  %154 = vmatprep.subr.mxu0 0.0
  %155 = vmatpush1.msra.mxu0 %v128
  %156 = vmatprep.subr.mxu0 0.0
  %157 = vmatpush1.msra.mxu0 %v68
  %158 = vmatprep.subr.mxu0 0.0
  %159 = vmatpush1.msra.mxu0 %v67
  %160 = vmatprep.subr.mxu0 0.0
  %161 = vmatpush1.msra.mxu0 %v66
  %162 = vmatprep.subr.mxu0 0.0
  %163 = vmatpush2.msra.mxu0 0.0
  %164 = vmatprep.subr.mxu0 0.0
  %165 = vmatpush2.msra.mxu0 0.0
  %166 = vmatprep.subr.mxu0 0.0
  %167 = vmatpush2.msra.mxu0 0.0
  %168 = vmatprep.subr.mxu0 0.0
  %169 = vmatpush2.msra.mxu0 0.0
  %170 = vmatprep.subr.mxu0 0.0
  %171 = vmatpush2.msra.mxu0 0.0
  %172 = vmatprep.subr.mxu0 0.0
  %173 = vmatpush2.msra.mxu0 0.0
  %174 = vmatprep.subr.mxu0 0.0
  %175 = vmatpush2.msra.mxu0 0.0
  %176 = vmatprep.subr.mxu0 0.0
  %177 = vmatpush2.msra.mxu0 0.0
  %178 = vmatprep.subr.mxu0 0.0
  %179 = vmatpush2.msra.mxu0 0.0
  %180 = vmatprep.subr.mxu0 0.0
  %181 = vmatpush2.msra.mxu0 0.0
  %182 = vmatprep.subr.mxu0 0.0
  %183 = vmatpush2.msra.mxu0 0.0
  %184 = vmatprep.subr.mxu0 0.0
  %185 = vmatpush2.msra.mxu0 0.0
  %186 = vmatprep.subr.mxu0 0.0
  %187 = vmatpush2.msra.mxu0 0.0
  %188 = vmatprep.subr.mxu0 0.0
  %189 = vmatpush2.msra.mxu0 0.0
  %190 = vmatprep.subr.mxu0 0.0
  %191 = vmatpush2.msra.mxu0 0.0
  %192 = vmatprep.subr.mxu0 0.0
  %193 = vmatpush2.msra.mxu0 0.0
  %194 = vmatprep.mubr.f32.mxu0 0.0
  %195 = vmatmul.mubr.f32.gmra.mxu0 %v79
  %v196 = vpop.f32.mrf.mxu0
  %v197 = vadd.f32 %v75, %v196
  %v198 = vpop.f32.mrf.mxu0
  %199 = vmatprep.mubr.f32.mxu0 0.0
  %200 = vmatmul.mubr.f32.gmra.mxu0 %v82
  %v201 = vpop.f32.mrf.mxu0
  %v202 = vadd.f32 %v75, %v201
  %v203 = vpop.f32.mrf.mxu0
  %204 = vmatprep.mubr.f32.mxu0 0.0
  %205 = vmatmul.mubr.f32.gmra.mxu0 %v85
  %v206 = vpop.f32.mrf.mxu0
  %v207 = vadd.f32 %v75, %v206
  %v208 = vpop.f32.mrf.mxu0
  %209 = vmatprep.mubr.f32.mxu0 0.0
  %210 = vmatmul.mubr.f32.gmra.mxu0 %v88
  %v211 = vpop.f32.mrf.mxu0
  %v212 = vadd.f32 %v75, %v211
  %v213 = vpop.f32.mrf.mxu0
  %214 = vmatprep.mubr.f32.mxu0 0.0
  %215 = vmatmul.mubr.f32.gmra.mxu0 %v91
  %v216 = vpop.f32.mrf.mxu0
  %v217 = vadd.f32 %v75, %v216
  %v218 = vpop.f32.mrf.mxu0
  %219 = vmatprep.mubr.f32.mxu0 0.0
  %220 = vmatmul.mubr.f32.gmra.mxu0 %v94
  %v221 = vpop.f32.mrf.mxu0
  %v222 = vadd.f32 %v75, %v221
  %v223 = vpop.f32.mrf.mxu0
  %224 = vmatprep.mubr.f32.mxu0 0.0
  %225 = vmatmul.mubr.f32.gmra.mxu0 %v97
  %v226 = vpop.f32.mrf.mxu0
  %v227 = vadd.f32 %v75, %v226
  %v228 = vpop.f32.mrf.mxu0
  %229 = vmatprep.mubr.f32.mxu0 0.0
  %230 = vmatmul.mubr.f32.gmra.mxu0 %v100
  %v231 = vpop.f32.mrf.mxu0
  %v232 = vadd.f32 %v75, %v231
  %v233 = vpop.f32.mrf.mxu0
  %234 = vmatprep.mubr.f32.mxu0 0.0
  %235 = vmatmul.mubr.f32.gmra.mxu0 %v103
  %v236 = vpop.f32.mrf.mxu0
  %v237 = vadd.f32 %v75, %v236
  %v238 = vpop.f32.mrf.mxu0
  %239 = vmatprep.mubr.f32.mxu0 0.0
  %240 = vmatmul.mubr.f32.gmra.mxu0 %v106
  %v241 = vpop.f32.mrf.mxu0
  %v242 = vadd.f32 %v75, %v241
  %v243 = vpop.f32.mrf.mxu0
  %244 = vmatprep.mubr.f32.mxu0 0.0
  %245 = vmatmul.mubr.f32.gmra.mxu0 %v109
  %v246 = vpop.f32.mrf.mxu0
  %v247 = vadd.f32 %v75, %v246
  %v248 = vpop.f32.mrf.mxu0
  %249 = vmatprep.mubr.f32.mxu0 0.0
  %250 = vmatmul.mubr.f32.gmra.mxu0 %v112
  %v251 = vpop.f32.mrf.mxu0
  %v252 = vadd.f32 %v75, %v251
  %v253 = vpop.f32.mrf.mxu0
  %254 = vmatprep.mubr.f32.mxu0 0.0
  %255 = vmatmul.mubr.f32.gmra.mxu0 %v115
  %v256 = vpop.f32.mrf.mxu0
  %v257 = vadd.f32 %v75, %v256
  %v258 = vpop.f32.mrf.mxu0
  %259 = vmatprep.mubr.f32.mxu0 0.0
  %260 = vmatmul.mubr.f32.gmra.mxu0 %v118
  %v261 = vpop.f32.mrf.mxu0
  %v262 = vadd.f32 %v75, %v261
  %v263 = vpop.f32.mrf.mxu0
  %264 = vmatprep.mubr.f32.mxu0 0.0
  %265 = vmatmul.mubr.f32.gmra.mxu0 %v121
  %v266 = vpop.f32.mrf.mxu0
  %v267 = vadd.f32 %v75, %v266
  %v268 = vpop.f32.mrf.mxu0
  %269 = vmatprep.mubr.f32.mxu0 0.0
  %270 = vmatmul.mubr.f32.gmra.mxu0 %v124
  %v271 = vpop.f32.mrf.mxu0
  %v272 = vadd.f32 %v75, %v271
  %v273 = vpop.f32.mrf.mxu0
  %274 = vdwg.mxu0
  %v275 = vmax.f32 %v197, 0.0
  %v276 = vmax.f32 %v202, 0.0
  %v277 = vmax.f32 %v207, 0.0
  %v278 = vmax.f32 %v212, 0.0
  %v279 = vmax.f32 %v217, 0.0
  %v280 = vmax.f32 %v222, 0.0
  %v281 = vmax.f32 %v227, 0.0
  %v282 = vmax.f32 %v232, 0.0
  %v283 = vmax.f32 %v237, 0.0
  %v284 = vmax.f32 %v242, 0.0
  %v285 = vmax.f32 %v247, 0.0
  %v286 = vmax.f32 %v252, 0.0
  %v287 = vmax.f32 %v257, 0.0
  %v288 = vmax.f32 %v262, 0.0
  %v289 = vmax.f32 %v267, 0.0
  %v290 = vmax.f32 %v272, 0.0
  %v291 = vld [vmem:[%s5] sm:$0x1]
  %s292 = scalar_lea.vmem %s1, 384
  %v293 = vld [vmem:[%s292] sm:$0xff]
  %v294 = vld [vmem:[%s292 + $0x8] sm:$0xff]
  %v295 = vld [vmem:[%s292 + $0x10] sm:$0xff]
  %v296 = vld [vmem:[%s292 + $0x18] sm:$0xff]
  %v297 = vld [vmem:[%s292 + $0x20] sm:$0xff]
  %v298 = vld [vmem:[%s292 + $0x28] sm:$0xff]
  %v299 = vld [vmem:[%s292 + $0x30] sm:$0xff]
  %v300 = vld [vmem:[%s292 + $0x38] sm:$0xff]
  %v301 = vld [vmem:[%s292 + $0x40] sm:$0xff]
  %v302 = vld [vmem:[%s292 + $0x48] sm:$0xff]
  %v303 = vld [vmem:[%s292 + $0x50] sm:$0xff]
  %v304 = vld [vmem:[%s292 + $0x58] sm:$0xff]
  %v305 = vld [vmem:[%s292 + $0x60] sm:$0xff]
  %v306 = vld [vmem:[%s292 + $0x68] sm:$0xff]
  %v307 = vld [vmem:[%s292 + $0x70] sm:$0xff]
  %v308 = vld [vmem:[%s292 + $0x78] sm:$0xff]
  %309 = vmatprep.subr.mxu0 0.0
  %310 = vmatpush1.msra.mxu0 %v290
  %311 = vmatprep.subr.mxu0 0.0
  %312 = vmatpush1.msra.mxu0 %v289
  %313 = vmatprep.subr.mxu0 0.0
  %314 = vmatpush1.msra.mxu0 %v288
  %315 = vmatprep.subr.mxu0 0.0
  %316 = vmatpush1.msra.mxu0 %v287
  %317 = vmatprep.subr.mxu0 0.0
  %318 = vmatpush1.msra.mxu0 %v286
  %319 = vmatprep.subr.mxu0 0.0
  %320 = vmatpush1.msra.mxu0 %v285
  %321 = vmatprep.subr.mxu0 0.0
  %322 = vmatpush1.msra.mxu0 %v284
  %323 = vmatprep.subr.mxu0 0.0
  %324 = vmatpush1.msra.mxu0 %v283
  %325 = vmatprep.subr.mxu0 0.0
  %326 = vmatpush1.msra.mxu0 %v282
  %327 = vmatprep.subr.mxu0 0.0
  %328 = vmatpush1.msra.mxu0 %v281
  %329 = vmatprep.subr.mxu0 0.0
  %330 = vmatpush1.msra.mxu0 %v280
  %331 = vmatprep.subr.mxu0 0.0
  %332 = vmatpush1.msra.mxu0 %v279
  %333 = vmatprep.subr.mxu0 0.0
  %334 = vmatpush1.msra.mxu0 %v278
  %335 = vmatprep.subr.mxu0 0.0
  %336 = vmatpush1.msra.mxu0 %v277
  %337 = vmatprep.subr.mxu0 0.0
  %338 = vmatpush1.msra.mxu0 %v276
  %339 = vmatprep.subr.mxu0 0.0
  %340 = vmatpush1.msra.mxu0 %v275
  %341 = vmatprep.subr.mxu0 0.0
  %342 = vmatpush2.msra.mxu0 0.0
  %343 = vmatprep.subr.mxu0 0.0
  %344 = vmatpush2.msra.mxu0 0.0
  %345 = vmatprep.subr.mxu0 0.0
  %346 = vmatpush2.msra.mxu0 0.0
  %347 = vmatprep.subr.mxu0 0.0
  %348 = vmatpush2.msra.mxu0 0.0
  %349 = vmatprep.subr.mxu0 0.0
  %350 = vmatpush2.msra.mxu0 0.0
  %351 = vmatprep.subr.mxu0 0.0
  %352 = vmatpush2.msra.mxu0 0.0
  %353 = vmatprep.subr.mxu0 0.0
  %354 = vmatpush2.msra.mxu0 0.0
  %355 = vmatprep.subr.mxu0 0.0
  %356 = vmatpush2.msra.mxu0 0.0
  %357 = vmatprep.subr.mxu0 0.0
  %358 = vmatpush2.msra.mxu0 0.0
  %359 = vmatprep.subr.mxu0 0.0
  %360 = vmatpush2.msra.mxu0 0.0
  %361 = vmatprep.subr.mxu0 0.0
  %362 = vmatpush2.msra.mxu0 0.0
  %363 = vmatprep.subr.mxu0 0.0
  %364 = vmatpush2.msra.mxu0 0.0
  %365 = vmatprep.subr.mxu0 0.0
  %366 = vmatpush2.msra.mxu0 0.0
  %367 = vmatprep.subr.mxu0 0.0
  %368 = vmatpush2.msra.mxu0 0.0
  %369 = vmatprep.subr.mxu0 0.0
  %370 = vmatpush2.msra.mxu0 0.0
  %371 = vmatprep.subr.mxu0 0.0
  %372 = vmatpush2.msra.mxu0 0.0
  %373 = vmatprep.mubr.f32.mxu0 0.0
  %374 = vmatmul.mubr.f32.gmra.mxu0 %v293
  %v375 = vpop.f32.mrf.mxu0
  %v376 = vadd.f32 0.0, %v375
  %v377 = vpop.f32.mrf.mxu0
  %378 = vmatprep.mubr.f32.mxu0 0.0
  %379 = vmatmul.mubr.f32.gmra.mxu0 %v294
  %v380 = vpop.f32.mrf.mxu0
  %v381 = vadd.f32 0.0, %v380
  %v382 = vpop.f32.mrf.mxu0
  %383 = vmatprep.mubr.f32.mxu0 0.0
  %384 = vmatmul.mubr.f32.gmra.mxu0 %v295
  %v385 = vpop.f32.mrf.mxu0
  %v386 = vadd.f32 0.0, %v385
  %v387 = vpop.f32.mrf.mxu0
  %388 = vmatprep.mubr.f32.mxu0 0.0
  %389 = vmatmul.mubr.f32.gmra.mxu0 %v296
  %v390 = vpop.f32.mrf.mxu0
  %v391 = vadd.f32 0.0, %v390
  %v392 = vpop.f32.mrf.mxu0
  %393 = vmatprep.mubr.f32.mxu0 0.0
  %394 = vmatmul.mubr.f32.gmra.mxu0 %v297
  %v395 = vpop.f32.mrf.mxu0
  %v396 = vadd.f32 0.0, %v395
  %v397 = vpop.f32.mrf.mxu0
  %398 = vmatprep.mubr.f32.mxu0 0.0
  %399 = vmatmul.mubr.f32.gmra.mxu0 %v298
  %v400 = vpop.f32.mrf.mxu0
  %v401 = vadd.f32 0.0, %v400
  %v402 = vpop.f32.mrf.mxu0
  %403 = vmatprep.mubr.f32.mxu0 0.0
  %404 = vmatmul.mubr.f32.gmra.mxu0 %v299
  %v405 = vpop.f32.mrf.mxu0
  %v406 = vadd.f32 0.0, %v405
  %v407 = vpop.f32.mrf.mxu0
  %408 = vmatprep.mubr.f32.mxu0 0.0
  %409 = vmatmul.mubr.f32.gmra.mxu0 %v300
  %v410 = vpop.f32.mrf.mxu0
  %v411 = vadd.f32 0.0, %v410
  %v412 = vpop.f32.mrf.mxu0
  %413 = vmatprep.mubr.f32.mxu0 0.0
  %414 = vmatmul.mubr.f32.gmra.mxu0 %v301
  %v415 = vpop.f32.mrf.mxu0
  %v416 = vadd.f32 0.0, %v415
  %v417 = vpop.f32.mrf.mxu0
  %418 = vmatprep.mubr.f32.mxu0 0.0
  %419 = vmatmul.mubr.f32.gmra.mxu0 %v302
  %v420 = vpop.f32.mrf.mxu0
  %v421 = vadd.f32 0.0, %v420
  %v422 = vpop.f32.mrf.mxu0
  %423 = vmatprep.mubr.f32.mxu0 0.0
  %424 = vmatmul.mubr.f32.gmra.mxu0 %v303
  %v425 = vpop.f32.mrf.mxu0
  %v426 = vadd.f32 0.0, %v425
  %v427 = vpop.f32.mrf.mxu0
  %428 = vmatprep.mubr.f32.mxu0 0.0
  %429 = vmatmul.mubr.f32.gmra.mxu0 %v304
  %v430 = vpop.f32.mrf.mxu0
  %v431 = vadd.f32 0.0, %v430
  %v432 = vpop.f32.mrf.mxu0
  %433 = vmatprep.mubr.f32.mxu0 0.0
  %434 = vmatmul.mubr.f32.gmra.mxu0 %v305
  %v435 = vpop.f32.mrf.mxu0
  %v436 = vadd.f32 0.0, %v435
  %v437 = vpop.f32.mrf.mxu0
  %438 = vmatprep.mubr.f32.mxu0 0.0
  %439 = vmatmul.mubr.f32.gmra.mxu0 %v306
  %v440 = vpop.f32.mrf.mxu0
  %v441 = vadd.f32 0.0, %v440
  %v442 = vpop.f32.mrf.mxu0
  %443 = vmatprep.mubr.f32.mxu0 0.0
  %444 = vmatmul.mubr.f32.gmra.mxu0 %v307
  %v445 = vpop.f32.mrf.mxu0
  %v446 = vadd.f32 0.0, %v445
  %v447 = vpop.f32.mrf.mxu0
  %448 = vmatprep.mubr.f32.mxu0 0.0
  %449 = vmatmul.mubr.f32.gmra.mxu0 %v308
  %v450 = vpop.f32.mrf.mxu0
  %v451 = vadd.f32 0.0, %v450
  %v452 = vpop.f32.mrf.mxu0
  %453 = vdwg.mxu0
  %v454 = vld [vmem:[%s4] sm:$0xff]
  %v455 = vld [vmem:[%s4 + $0x8] sm:$0xff]
  %v456 = vld [vmem:[%s4 + $0x10] sm:$0xff]
  %v457 = vld [vmem:[%s4 + $0x18] sm:$0xff]
  %vm458 = vcmask 261120
  %v460 = vsel %vm458, %v376, 0
  %v463 = vsel %vm458, %v381, 0
  %v466 = vsel %vm458, %v386, 0
  %v469 = vsel %vm458, %v391, 0
  %v472 = vsel %vm458, %v396, 0
  %v475 = vsel %vm458, %v401, 0
  %v478 = vsel %vm458, %v406, 0
  %v481 = vsel %vm458, %v411, 0
  %v484 = vsel %vm458, %v416, 0
  %v487 = vsel %vm458, %v421, 0
  %v490 = vsel %vm458, %v426, 0
  %v493 = vsel %vm458, %v431, 0
  %v496 = vsel %vm458, %v436, 0
  %v499 = vsel %vm458, %v441, 0
  %v502 = vsel %vm458, %v446, 0
  %v505 = vsel %vm458, %v451, 0
  %507 = vmatprep.subr.mxu0 0.0
  %508 = vmatpush1.msra.mxu0 0.0
  %509 = vmatprep.subr.mxu0 0.0
  %510 = vmatpush1.msra.mxu0 0.0
  %511 = vmatprep.subr.mxu0 0.0
  %512 = vmatpush1.msra.mxu0 0.0
  %513 = vmatprep.subr.mxu0 0.0
  %514 = vmatpush1.msra.mxu0 0.0
  %515 = vmatprep.subr.mxu0 0.0
  %516 = vmatpush1.msra.mxu0 0.0
  %517 = vmatprep.subr.mxu0 0.0
  %518 = vmatpush1.msra.mxu0 0.0
  %519 = vmatprep.subr.mxu0 0.0
  %520 = vmatpush1.msra.mxu0 0.0
  %521 = vmatprep.subr.mxu0 0.0
  %522 = vmatpush1.msra.mxu0 0.0
  %523 = vmatprep.subr.mxu0 0.0
  %524 = vmatpush1.msra.mxu0 0.0
  %525 = vmatprep.subr.mxu0 0.0
  %526 = vmatpush1.msra.mxu0 0.0
  %527 = vmatprep.subr.mxu0 0.0
  %528 = vmatpush1.msra.mxu0 0.0
  %529 = vmatprep.subr.mxu0 0.0
  %530 = vmatpush1.msra.mxu0 0.0
  %531 = vmatprep.subr.mxu0 0.0
  %532 = vmatpush1.msra.mxu0 %v457
  %533 = vmatprep.subr.mxu0 0.0
  %534 = vmatpush1.msra.mxu0 %v456
  %535 = vmatprep.subr.mxu0 0.0
  %536 = vmatpush1.msra.mxu0 %v455
  %537 = vmatprep.subr.mxu0 0.0
  %538 = vmatpush1.msra.mxu0 %v454
  %539 = vmatprep.subr.mxu0 0.0
  %540 = vmatpush2.msra.mxu0 0.0
  %541 = vmatprep.subr.mxu0 0.0
  %542 = vmatpush2.msra.mxu0 0.0
  %543 = vmatprep.subr.mxu0 0.0
  %544 = vmatpush2.msra.mxu0 0.0
  %545 = vmatprep.subr.mxu0 0.0
  %546 = vmatpush2.msra.mxu0 0.0
  %547 = vmatprep.subr.mxu0 0.0
  %548 = vmatpush2.msra.mxu0 0.0
  %549 = vmatprep.subr.mxu0 0.0
  %550 = vmatpush2.msra.mxu0 0.0
  %551 = vmatprep.subr.mxu0 0.0
  %552 = vmatpush2.msra.mxu0 0.0
  %553 = vmatprep.subr.mxu0 0.0
  %554 = vmatpush2.msra.mxu0 0.0
  %555 = vmatprep.subr.mxu0 0.0
  %556 = vmatpush2.msra.mxu0 0.0
  %557 = vmatprep.subr.mxu0 0.0
  %558 = vmatpush2.msra.mxu0 0.0
  %559 = vmatprep.subr.mxu0 0.0
  %560 = vmatpush2.msra.mxu0 0.0
  %561 = vmatprep.subr.mxu0 0.0
  %562 = vmatpush2.msra.mxu0 0.0
  %563 = vmatprep.subr.mxu0 0.0
  %564 = vmatpush2.msra.mxu0 0.0
  %565 = vmatprep.subr.mxu0 0.0
  %566 = vmatpush2.msra.mxu0 0.0
  %567 = vmatprep.subr.mxu0 0.0
  %568 = vmatpush2.msra.mxu0 0.0
  %569 = vmatprep.subr.mxu0 0.0
  %570 = vmatpush2.msra.mxu0 0.0
  %571 = vmatprep.mubr.f32.mxu0 0.0
  %572 = vmatmul.mubr.f32.gmra.mxu0 %v460
  %v573 = vpop.f32.mrf.mxu0
  %v574 = vadd.f32 0.0, %v573
  %v575 = vpop.f32.mrf.mxu0
  %576 = vmatprep.mubr.f32.mxu0 0.0
  %577 = vmatmul.mubr.f32.gmra.mxu0 %v463
  %v578 = vpop.f32.mrf.mxu0
  %v579 = vadd.f32 0.0, %v578
  %v580 = vpop.f32.mrf.mxu0
  %581 = vmatprep.mubr.f32.mxu0 0.0
  %582 = vmatmul.mubr.f32.gmra.mxu0 %v466
  %v583 = vpop.f32.mrf.mxu0
  %v584 = vadd.f32 0.0, %v583
  %v585 = vpop.f32.mrf.mxu0
  %586 = vmatprep.mubr.f32.mxu0 0.0
  %587 = vmatmul.mubr.f32.gmra.mxu0 %v469
  %v588 = vpop.f32.mrf.mxu0
  %v589 = vadd.f32 0.0, %v588
  %v590 = vpop.f32.mrf.mxu0
  %591 = vmatprep.mubr.f32.mxu0 0.0
  %592 = vmatmul.mubr.f32.gmra.mxu0 %v472
  %v593 = vpop.f32.mrf.mxu0
  %v594 = vadd.f32 0.0, %v593
  %v595 = vpop.f32.mrf.mxu0
  %596 = vmatprep.mubr.f32.mxu0 0.0
  %597 = vmatmul.mubr.f32.gmra.mxu0 %v475
  %v598 = vpop.f32.mrf.mxu0
  %v599 = vadd.f32 0.0, %v598
  %v600 = vpop.f32.mrf.mxu0
  %601 = vmatprep.mubr.f32.mxu0 0.0
  %602 = vmatmul.mubr.f32.gmra.mxu0 %v478
  %v603 = vpop.f32.mrf.mxu0
  %v604 = vadd.f32 0.0, %v603
  %v605 = vpop.f32.mrf.mxu0
  %606 = vmatprep.mubr.f32.mxu0 0.0
  %607 = vmatmul.mubr.f32.gmra.mxu0 %v481
  %v608 = vpop.f32.mrf.mxu0
  %v609 = vadd.f32 0.0, %v608
  %v610 = vpop.f32.mrf.mxu0
  %611 = vmatprep.mubr.f32.mxu0 0.0
  %612 = vmatmul.mubr.f32.gmra.mxu0 %v484
  %v613 = vpop.f32.mrf.mxu0
  %v614 = vadd.f32 0.0, %v613
  %v615 = vpop.f32.mrf.mxu0
  %616 = vmatprep.mubr.f32.mxu0 0.0
  %617 = vmatmul.mubr.f32.gmra.mxu0 %v487
  %v618 = vpop.f32.mrf.mxu0
  %v619 = vadd.f32 0.0, %v618
  %v620 = vpop.f32.mrf.mxu0
  %621 = vmatprep.mubr.f32.mxu0 0.0
  %622 = vmatmul.mubr.f32.gmra.mxu0 %v490
  %v623 = vpop.f32.mrf.mxu0
  %v624 = vadd.f32 0.0, %v623
  %v625 = vpop.f32.mrf.mxu0
  %626 = vmatprep.mubr.f32.mxu0 0.0
  %627 = vmatmul.mubr.f32.gmra.mxu0 %v493
  %v628 = vpop.f32.mrf.mxu0
  %v629 = vadd.f32 0.0, %v628
  %v630 = vpop.f32.mrf.mxu0
  %631 = vmatprep.mubr.f32.mxu0 0.0
  %632 = vmatmul.mubr.f32.gmra.mxu0 %v496
  %v633 = vpop.f32.mrf.mxu0
  %v634 = vadd.f32 0.0, %v633
  %v635 = vpop.f32.mrf.mxu0
  %636 = vmatprep.mubr.f32.mxu0 0.0
  %637 = vmatmul.mubr.f32.gmra.mxu0 %v499
  %v638 = vpop.f32.mrf.mxu0
  %v639 = vadd.f32 0.0, %v638
  %v640 = vpop.f32.mrf.mxu0
  %641 = vmatprep.mubr.f32.mxu0 0.0
  %642 = vmatmul.mubr.f32.gmra.mxu0 %v502
  %v643 = vpop.f32.mrf.mxu0
  %v644 = vadd.f32 0.0, %v643
  %v645 = vpop.f32.mrf.mxu0
  %646 = vmatprep.mubr.f32.mxu0 0.0
  %647 = vmatmul.mubr.f32.gmra.mxu0 %v505
  %v648 = vpop.f32.mrf.mxu0
  %v649 = vadd.f32 0.0, %v648
  %v650 = vpop.f32.mrf.mxu0
  %651 = vdwg.mxu0
  %v653 = vlaneseq
  %v654 = vshrl.u32 %v653, 7
  %v655 = vsub.s32 0, %v654
  %v656 = vrot.slane %v291, %v655
  %v658 = vadd.f32 %v656, %v574
  %v659 = vadd.f32 %v656, %v579
  %v660 = vadd.f32 %v656, %v584
  %v661 = vadd.f32 %v656, %v589
  %v662 = vadd.f32 %v656, %v594
  %v663 = vadd.f32 %v656, %v599
  %v664 = vadd.f32 %v656, %v604
  %v665 = vadd.f32 %v656, %v609
  %v666 = vadd.f32 %v656, %v614
  %v667 = vadd.f32 %v656, %v619
  %v668 = vadd.f32 %v656, %v624
  %v669 = vadd.f32 %v656, %v629
  %v670 = vadd.f32 %v656, %v634
  %v671 = vadd.f32 %v656, %v639
  %v672 = vadd.f32 %v656, %v644
  %v673 = vadd.f32 %v656, %v649
  %s674 = scalar_lea.vmem %s1, 512
  %v675 = vld [vmem:[%s674] sm:$0xff]
  %v676 = vld [vmem:[%s674 + $0x8] sm:$0xff]
  %v677 = vld [vmem:[%s674 + $0x10] sm:$0xff]
  %v678 = vld [vmem:[%s674 + $0x18] sm:$0xff]
  %v679 = vld [vmem:[%s674 + $0x20] sm:$0xff]
  %v680 = vld [vmem:[%s674 + $0x28] sm:$0xff]
  %v681 = vld [vmem:[%s674 + $0x30] sm:$0xff]
  %v682 = vld [vmem:[%s674 + $0x38] sm:$0xff]
  %v683 = vld [vmem:[%s674 + $0x40] sm:$0xff]
  %v684 = vld [vmem:[%s674 + $0x48] sm:$0xff]
  %v685 = vld [vmem:[%s674 + $0x50] sm:$0xff]
  %v686 = vld [vmem:[%s674 + $0x58] sm:$0xff]
  %v687 = vld [vmem:[%s674 + $0x60] sm:$0xff]
  %v688 = vld [vmem:[%s674 + $0x68] sm:$0xff]
  %v689 = vld [vmem:[%s674 + $0x70] sm:$0xff]
  %v690 = vld [vmem:[%s674 + $0x78] sm:$0xff]
  %691 = vmatprep.subr.mxu0 0.0
  %692 = vmatpush1.msra.mxu0 %v290
  %693 = vmatprep.subr.mxu0 0.0
  %694 = vmatpush1.msra.mxu0 %v289
  %695 = vmatprep.subr.mxu0 0.0
  %696 = vmatpush1.msra.mxu0 %v288
  %697 = vmatprep.subr.mxu0 0.0
  %698 = vmatpush1.msra.mxu0 %v287
  %699 = vmatprep.subr.mxu0 0.0
  %700 = vmatpush1.msra.mxu0 %v286
  %701 = vmatprep.subr.mxu0 0.0
  %702 = vmatpush1.msra.mxu0 %v285
  %703 = vmatprep.subr.mxu0 0.0
  %704 = vmatpush1.msra.mxu0 %v284
  %705 = vmatprep.subr.mxu0 0.0
  %706 = vmatpush1.msra.mxu0 %v283
  %707 = vmatprep.subr.mxu0 0.0
  %708 = vmatpush1.msra.mxu0 %v282
  %709 = vmatprep.subr.mxu0 0.0
  %710 = vmatpush1.msra.mxu0 %v281
  %711 = vmatprep.subr.mxu0 0.0
  %712 = vmatpush1.msra.mxu0 %v280
  %713 = vmatprep.subr.mxu0 0.0
  %714 = vmatpush1.msra.mxu0 %v279
  %715 = vmatprep.subr.mxu0 0.0
  %716 = vmatpush1.msra.mxu0 %v278
  %717 = vmatprep.subr.mxu0 0.0
  %718 = vmatpush1.msra.mxu0 %v277
  %719 = vmatprep.subr.mxu0 0.0
  %720 = vmatpush1.msra.mxu0 %v276
  %721 = vmatprep.subr.mxu0 0.0
  %722 = vmatpush1.msra.mxu0 %v275
  %723 = vmatprep.subr.mxu0 0.0
  %724 = vmatpush2.msra.mxu0 0.0
  %725 = vmatprep.subr.mxu0 0.0
  %726 = vmatpush2.msra.mxu0 0.0
  %727 = vmatprep.subr.mxu0 0.0
  %728 = vmatpush2.msra.mxu0 0.0
  %729 = vmatprep.subr.mxu0 0.0
  %730 = vmatpush2.msra.mxu0 0.0
  %731 = vmatprep.subr.mxu0 0.0
  %732 = vmatpush2.msra.mxu0 0.0
  %733 = vmatprep.subr.mxu0 0.0
  %734 = vmatpush2.msra.mxu0 0.0
  %735 = vmatprep.subr.mxu0 0.0
  %736 = vmatpush2.msra.mxu0 0.0
  %737 = vmatprep.subr.mxu0 0.0
  %738 = vmatpush2.msra.mxu0 0.0
  %739 = vmatprep.subr.mxu0 0.0
  %740 = vmatpush2.msra.mxu0 0.0
  %741 = vmatprep.subr.mxu0 0.0
  %742 = vmatpush2.msra.mxu0 0.0
  %743 = vmatprep.subr.mxu0 0.0
  %744 = vmatpush2.msra.mxu0 0.0
  %745 = vmatprep.subr.mxu0 0.0
  %746 = vmatpush2.msra.mxu0 0.0
  %747 = vmatprep.subr.mxu0 0.0
  %748 = vmatpush2.msra.mxu0 0.0
  %749 = vmatprep.subr.mxu0 0.0
  %750 = vmatpush2.msra.mxu0 0.0
  %751 = vmatprep.subr.mxu0 0.0
  %752 = vmatpush2.msra.mxu0 0.0
  %753 = vmatprep.subr.mxu0 0.0
  %754 = vmatpush2.msra.mxu0 0.0
  %755 = vmatprep.mubr.f32.mxu0 0.0
  %756 = vmatmul.mubr.f32.gmra.mxu0 %v675
  %v757 = vpop.f32.mrf.mxu0
  %v758 = vadd.f32 0.0, %v757
  %v759 = vpop.f32.mrf.mxu0
  %760 = vmatprep.mubr.f32.mxu0 0.0
  %761 = vmatmul.mubr.f32.gmra.mxu0 %v676
  %v762 = vpop.f32.mrf.mxu0
  %v763 = vadd.f32 0.0, %v762
  %v764 = vpop.f32.mrf.mxu0
  %765 = vmatprep.mubr.f32.mxu0 0.0
  %766 = vmatmul.mubr.f32.gmra.mxu0 %v677
  %v767 = vpop.f32.mrf.mxu0
  %v768 = vadd.f32 0.0, %v767
  %v769 = vpop.f32.mrf.mxu0
  %770 = vmatprep.mubr.f32.mxu0 0.0
  %771 = vmatmul.mubr.f32.gmra.mxu0 %v678
  %v772 = vpop.f32.mrf.mxu0
  %v773 = vadd.f32 0.0, %v772
  %v774 = vpop.f32.mrf.mxu0
  %775 = vmatprep.mubr.f32.mxu0 0.0
  %776 = vmatmul.mubr.f32.gmra.mxu0 %v679
  %v777 = vpop.f32.mrf.mxu0
  %v778 = vadd.f32 0.0, %v777
  %v779 = vpop.f32.mrf.mxu0
  %780 = vmatprep.mubr.f32.mxu0 0.0
  %781 = vmatmul.mubr.f32.gmra.mxu0 %v680
  %v782 = vpop.f32.mrf.mxu0
  %v783 = vadd.f32 0.0, %v782
  %v784 = vpop.f32.mrf.mxu0
  %785 = vmatprep.mubr.f32.mxu0 0.0
  %786 = vmatmul.mubr.f32.gmra.mxu0 %v681
  %v787 = vpop.f32.mrf.mxu0
  %v788 = vadd.f32 0.0, %v787
  %v789 = vpop.f32.mrf.mxu0
  %790 = vmatprep.mubr.f32.mxu0 0.0
  %791 = vmatmul.mubr.f32.gmra.mxu0 %v682
  %v792 = vpop.f32.mrf.mxu0
  %v793 = vadd.f32 0.0, %v792
  %v794 = vpop.f32.mrf.mxu0
  %795 = vmatprep.mubr.f32.mxu0 0.0
  %796 = vmatmul.mubr.f32.gmra.mxu0 %v683
  %v797 = vpop.f32.mrf.mxu0
  %v798 = vadd.f32 0.0, %v797
  %v799 = vpop.f32.mrf.mxu0
  %800 = vmatprep.mubr.f32.mxu0 0.0
  %801 = vmatmul.mubr.f32.gmra.mxu0 %v684
  %v802 = vpop.f32.mrf.mxu0
  %v803 = vadd.f32 0.0, %v802
  %v804 = vpop.f32.mrf.mxu0
  %805 = vmatprep.mubr.f32.mxu0 0.0
  %806 = vmatmul.mubr.f32.gmra.mxu0 %v685
  %v807 = vpop.f32.mrf.mxu0
  %v808 = vadd.f32 0.0, %v807
  %v809 = vpop.f32.mrf.mxu0
  %810 = vmatprep.mubr.f32.mxu0 0.0
  %811 = vmatmul.mubr.f32.gmra.mxu0 %v686
  %v812 = vpop.f32.mrf.mxu0
  %v813 = vadd.f32 0.0, %v812
  %v814 = vpop.f32.mrf.mxu0
  %815 = vmatprep.mubr.f32.mxu0 0.0
  %816 = vmatmul.mubr.f32.gmra.mxu0 %v687
  %v817 = vpop.f32.mrf.mxu0
  %v818 = vadd.f32 0.0, %v817
  %v819 = vpop.f32.mrf.mxu0
  %820 = vmatprep.mubr.f32.mxu0 0.0
  %821 = vmatmul.mubr.f32.gmra.mxu0 %v688
  %v822 = vpop.f32.mrf.mxu0
  %v823 = vadd.f32 0.0, %v822
  %v824 = vpop.f32.mrf.mxu0
  %825 = vmatprep.mubr.f32.mxu0 0.0
  %826 = vmatmul.mubr.f32.gmra.mxu0 %v689
  %v827 = vpop.f32.mrf.mxu0
  %v828 = vadd.f32 0.0, %v827
  %v829 = vpop.f32.mrf.mxu0
  %830 = vmatprep.mubr.f32.mxu0 0.0
  %831 = vmatmul.mubr.f32.gmra.mxu0 %v690
  %v832 = vpop.f32.mrf.mxu0
  %v833 = vadd.f32 0.0, %v832
  %v834 = vpop.f32.mrf.mxu0
  %835 = vdwg.mxu0
  %s836 = scalar_lea.vmem %s4, 32
  %v837 = vld [vmem:[%s836] sm:$0xff]
  %v838 = vld [vmem:[%s836 + $0x8] sm:$0xff]
  %v839 = vld [vmem:[%s836 + $0x10] sm:$0xff]
  %v840 = vld [vmem:[%s836 + $0x18] sm:$0xff]
  %v842 = vsel %vm458, %v758, 0
  %v845 = vsel %vm458, %v763, 0
  %v848 = vsel %vm458, %v768, 0
  %v851 = vsel %vm458, %v773, 0
  %v854 = vsel %vm458, %v778, 0
  %v857 = vsel %vm458, %v783, 0
  %v860 = vsel %vm458, %v788, 0
  %v863 = vsel %vm458, %v793, 0
  %v866 = vsel %vm458, %v798, 0
  %v869 = vsel %vm458, %v803, 0
  %v872 = vsel %vm458, %v808, 0
  %v875 = vsel %vm458, %v813, 0
  %v878 = vsel %vm458, %v818, 0
  %v881 = vsel %vm458, %v823, 0
  %v884 = vsel %vm458, %v828, 0
  %v887 = vsel %vm458, %v833, 0
  %889 = vmatprep.subr.mxu0 0.0
  %890 = vmatpush1.msra.mxu0 0.0
  %891 = vmatprep.subr.mxu0 0.0
  %892 = vmatpush1.msra.mxu0 0.0
  %893 = vmatprep.subr.mxu0 0.0
  %894 = vmatpush1.msra.mxu0 0.0
  %895 = vmatprep.subr.mxu0 0.0
  %896 = vmatpush1.msra.mxu0 0.0
  %897 = vmatprep.subr.mxu0 0.0
  %898 = vmatpush1.msra.mxu0 0.0
  %899 = vmatprep.subr.mxu0 0.0
  %900 = vmatpush1.msra.mxu0 0.0
  %901 = vmatprep.subr.mxu0 0.0
  %902 = vmatpush1.msra.mxu0 0.0
  %903 = vmatprep.subr.mxu0 0.0
  %904 = vmatpush1.msra.mxu0 0.0
  %905 = vmatprep.subr.mxu0 0.0
  %906 = vmatpush1.msra.mxu0 0.0
  %907 = vmatprep.subr.mxu0 0.0
  %908 = vmatpush1.msra.mxu0 0.0
  %909 = vmatprep.subr.mxu0 0.0
  %910 = vmatpush1.msra.mxu0 0.0
  %911 = vmatprep.subr.mxu0 0.0
  %912 = vmatpush1.msra.mxu0 0.0
  %913 = vmatprep.subr.mxu0 0.0
  %914 = vmatpush1.msra.mxu0 %v840
  %915 = vmatprep.subr.mxu0 0.0
  %916 = vmatpush1.msra.mxu0 %v839
  %917 = vmatprep.subr.mxu0 0.0
  %918 = vmatpush1.msra.mxu0 %v838
  %919 = vmatprep.subr.mxu0 0.0
  %920 = vmatpush1.msra.mxu0 %v837
  %921 = vmatprep.subr.mxu0 0.0
  %922 = vmatpush2.msra.mxu0 0.0
  %923 = vmatprep.subr.mxu0 0.0
  %924 = vmatpush2.msra.mxu0 0.0
  %925 = vmatprep.subr.mxu0 0.0
  %926 = vmatpush2.msra.mxu0 0.0
  %927 = vmatprep.subr.mxu0 0.0
  %928 = vmatpush2.msra.mxu0 0.0
  %929 = vmatprep.subr.mxu0 0.0
  %930 = vmatpush2.msra.mxu0 0.0
  %931 = vmatprep.subr.mxu0 0.0
  %932 = vmatpush2.msra.mxu0 0.0
  %933 = vmatprep.subr.mxu0 0.0
  %934 = vmatpush2.msra.mxu0 0.0
  %935 = vmatprep.subr.mxu0 0.0
  %936 = vmatpush2.msra.mxu0 0.0
  %937 = vmatprep.subr.mxu0 0.0
  %938 = vmatpush2.msra.mxu0 0.0
  %939 = vmatprep.subr.mxu0 0.0
  %940 = vmatpush2.msra.mxu0 0.0
  %941 = vmatprep.subr.mxu0 0.0
  %942 = vmatpush2.msra.mxu0 0.0
  %943 = vmatprep.subr.mxu0 0.0
  %944 = vmatpush2.msra.mxu0 0.0
  %945 = vmatprep.subr.mxu0 0.0
  %946 = vmatpush2.msra.mxu0 0.0
  %947 = vmatprep.subr.mxu0 0.0
  %948 = vmatpush2.msra.mxu0 0.0
  %949 = vmatprep.subr.mxu0 0.0
  %950 = vmatpush2.msra.mxu0 0.0
  %951 = vmatprep.subr.mxu0 0.0
  %952 = vmatpush2.msra.mxu0 0.0
  %953 = vmatprep.mubr.f32.mxu0 0.0
  %954 = vmatmul.mubr.f32.gmra.mxu0 %v842
  %v955 = vpop.f32.mrf.mxu0
  %v956 = vadd.f32 0.0, %v955
  %v957 = vpop.f32.mrf.mxu0
  %958 = vmatprep.mubr.f32.mxu0 0.0
  %959 = vmatmul.mubr.f32.gmra.mxu0 %v845
  %v960 = vpop.f32.mrf.mxu0
  %v961 = vadd.f32 0.0, %v960
  %v962 = vpop.f32.mrf.mxu0
  %963 = vmatprep.mubr.f32.mxu0 0.0
  %964 = vmatmul.mubr.f32.gmra.mxu0 %v848
  %v965 = vpop.f32.mrf.mxu0
  %v966 = vadd.f32 0.0, %v965
  %v967 = vpop.f32.mrf.mxu0
  %968 = vmatprep.mubr.f32.mxu0 0.0
  %969 = vmatmul.mubr.f32.gmra.mxu0 %v851
  %v970 = vpop.f32.mrf.mxu0
  %v971 = vadd.f32 0.0, %v970
  %v972 = vpop.f32.mrf.mxu0
  %973 = vmatprep.mubr.f32.mxu0 0.0
  %974 = vmatmul.mubr.f32.gmra.mxu0 %v854
  %v975 = vpop.f32.mrf.mxu0
  %v976 = vadd.f32 0.0, %v975
  %v977 = vpop.f32.mrf.mxu0
  %978 = vmatprep.mubr.f32.mxu0 0.0
  %979 = vmatmul.mubr.f32.gmra.mxu0 %v857
  %v980 = vpop.f32.mrf.mxu0
  %v981 = vadd.f32 0.0, %v980
  %v982 = vpop.f32.mrf.mxu0
  %983 = vmatprep.mubr.f32.mxu0 0.0
  %984 = vmatmul.mubr.f32.gmra.mxu0 %v860
  %v985 = vpop.f32.mrf.mxu0
  %v986 = vadd.f32 0.0, %v985
  %v987 = vpop.f32.mrf.mxu0
  %988 = vmatprep.mubr.f32.mxu0 0.0
  %989 = vmatmul.mubr.f32.gmra.mxu0 %v863
  %v990 = vpop.f32.mrf.mxu0
  %v991 = vadd.f32 0.0, %v990
  %v992 = vpop.f32.mrf.mxu0
  %993 = vmatprep.mubr.f32.mxu0 0.0
  %994 = vmatmul.mubr.f32.gmra.mxu0 %v866
  %v995 = vpop.f32.mrf.mxu0
  %v996 = vadd.f32 0.0, %v995
  %v997 = vpop.f32.mrf.mxu0
  %998 = vmatprep.mubr.f32.mxu0 0.0
  %999 = vmatmul.mubr.f32.gmra.mxu0 %v869
  %v1000 = vpop.f32.mrf.mxu0
  %v1001 = vadd.f32 0.0, %v1000
  %v1002 = vpop.f32.mrf.mxu0
  %1003 = vmatprep.mubr.f32.mxu0 0.0
  %1004 = vmatmul.mubr.f32.gmra.mxu0 %v872
  %v1005 = vpop.f32.mrf.mxu0
  %v1006 = vadd.f32 0.0, %v1005
  %v1007 = vpop.f32.mrf.mxu0
  %1008 = vmatprep.mubr.f32.mxu0 0.0
  %1009 = vmatmul.mubr.f32.gmra.mxu0 %v875
  %v1010 = vpop.f32.mrf.mxu0
  %v1011 = vadd.f32 0.0, %v1010
  %v1012 = vpop.f32.mrf.mxu0
  %1013 = vmatprep.mubr.f32.mxu0 0.0
  %1014 = vmatmul.mubr.f32.gmra.mxu0 %v878
  %v1015 = vpop.f32.mrf.mxu0
  %v1016 = vadd.f32 0.0, %v1015
  %v1017 = vpop.f32.mrf.mxu0
  %1018 = vmatprep.mubr.f32.mxu0 0.0
  %1019 = vmatmul.mubr.f32.gmra.mxu0 %v881
  %v1020 = vpop.f32.mrf.mxu0
  %v1021 = vadd.f32 0.0, %v1020
  %v1022 = vpop.f32.mrf.mxu0
  %1023 = vmatprep.mubr.f32.mxu0 0.0
  %1024 = vmatmul.mubr.f32.gmra.mxu0 %v884
  %v1025 = vpop.f32.mrf.mxu0
  %v1026 = vadd.f32 0.0, %v1025
  %v1027 = vpop.f32.mrf.mxu0
  %1028 = vmatprep.mubr.f32.mxu0 0.0
  %1029 = vmatmul.mubr.f32.gmra.mxu0 %v887
  %v1030 = vpop.f32.mrf.mxu0
  %v1031 = vadd.f32 0.0, %v1030
  %v1032 = vpop.f32.mrf.mxu0
  %1033 = vdwg.mxu0
  %v1034 = vadd.f32 %v658, %v956
  %v1035 = vadd.f32 %v659, %v961
  %v1036 = vadd.f32 %v660, %v966
  %v1037 = vadd.f32 %v661, %v971
  %v1038 = vadd.f32 %v662, %v976
  %v1039 = vadd.f32 %v663, %v981
  %v1040 = vadd.f32 %v664, %v986
  %v1041 = vadd.f32 %v665, %v991
  %v1042 = vadd.f32 %v666, %v996
  %v1043 = vadd.f32 %v667, %v1001
  %v1044 = vadd.f32 %v668, %v1006
  %v1045 = vadd.f32 %v669, %v1011
  %v1046 = vadd.f32 %v670, %v1016
  %v1047 = vadd.f32 %v671, %v1021
  %v1048 = vadd.f32 %v672, %v1026
  %v1049 = vadd.f32 %v673, %v1031
  %s1050 = scalar_lea.vmem %s1, 640
  %v1051 = vld [vmem:[%s1050] sm:$0xff]
  %v1052 = vld [vmem:[%s1050 + $0x8] sm:$0xff]
  %v1053 = vld [vmem:[%s1050 + $0x10] sm:$0xff]
  %v1054 = vld [vmem:[%s1050 + $0x18] sm:$0xff]
  %v1055 = vld [vmem:[%s1050 + $0x20] sm:$0xff]
  %v1056 = vld [vmem:[%s1050 + $0x28] sm:$0xff]
  %v1057 = vld [vmem:[%s1050 + $0x30] sm:$0xff]
  %v1058 = vld [vmem:[%s1050 + $0x38] sm:$0xff]
  %v1059 = vld [vmem:[%s1050 + $0x40] sm:$0xff]
  %v1060 = vld [vmem:[%s1050 + $0x48] sm:$0xff]
  %v1061 = vld [vmem:[%s1050 + $0x50] sm:$0xff]
  %v1062 = vld [vmem:[%s1050 + $0x58] sm:$0xff]
  %v1063 = vld [vmem:[%s1050 + $0x60] sm:$0xff]
  %v1064 = vld [vmem:[%s1050 + $0x68] sm:$0xff]
  %v1065 = vld [vmem:[%s1050 + $0x70] sm:$0xff]
  %v1066 = vld [vmem:[%s1050 + $0x78] sm:$0xff]
  %1067 = vmatprep.subr.mxu0 0.0
  %1068 = vmatpush1.msra.mxu0 %v290
  %1069 = vmatprep.subr.mxu0 0.0
  %1070 = vmatpush1.msra.mxu0 %v289
  %1071 = vmatprep.subr.mxu0 0.0
  %1072 = vmatpush1.msra.mxu0 %v288
  %1073 = vmatprep.subr.mxu0 0.0
  %1074 = vmatpush1.msra.mxu0 %v287
  %1075 = vmatprep.subr.mxu0 0.0
  %1076 = vmatpush1.msra.mxu0 %v286
  %1077 = vmatprep.subr.mxu0 0.0
  %1078 = vmatpush1.msra.mxu0 %v285
  %1079 = vmatprep.subr.mxu0 0.0
  %1080 = vmatpush1.msra.mxu0 %v284
  %1081 = vmatprep.subr.mxu0 0.0
  %1082 = vmatpush1.msra.mxu0 %v283
  %1083 = vmatprep.subr.mxu0 0.0
  %1084 = vmatpush1.msra.mxu0 %v282
  %1085 = vmatprep.subr.mxu0 0.0
  %1086 = vmatpush1.msra.mxu0 %v281
  %1087 = vmatprep.subr.mxu0 0.0
  %1088 = vmatpush1.msra.mxu0 %v280
  %1089 = vmatprep.subr.mxu0 0.0
  %1090 = vmatpush1.msra.mxu0 %v279
  %1091 = vmatprep.subr.mxu0 0.0
  %1092 = vmatpush1.msra.mxu0 %v278
  %1093 = vmatprep.subr.mxu0 0.0
  %1094 = vmatpush1.msra.mxu0 %v277
  %1095 = vmatprep.subr.mxu0 0.0
  %1096 = vmatpush1.msra.mxu0 %v276
  %1097 = vmatprep.subr.mxu0 0.0
  %1098 = vmatpush1.msra.mxu0 %v275
  %1099 = vmatprep.subr.mxu0 0.0
  %1100 = vmatpush2.msra.mxu0 0.0
  %1101 = vmatprep.subr.mxu0 0.0
  %1102 = vmatpush2.msra.mxu0 0.0
  %1103 = vmatprep.subr.mxu0 0.0
  %1104 = vmatpush2.msra.mxu0 0.0
  %1105 = vmatprep.subr.mxu0 0.0
  %1106 = vmatpush2.msra.mxu0 0.0
  %1107 = vmatprep.subr.mxu0 0.0
  %1108 = vmatpush2.msra.mxu0 0.0
  %1109 = vmatprep.subr.mxu0 0.0
  %1110 = vmatpush2.msra.mxu0 0.0
  %1111 = vmatprep.subr.mxu0 0.0
  %1112 = vmatpush2.msra.mxu0 0.0
  %1113 = vmatprep.subr.mxu0 0.0
  %1114 = vmatpush2.msra.mxu0 0.0
  %1115 = vmatprep.subr.mxu0 0.0
  %1116 = vmatpush2.msra.mxu0 0.0
  %1117 = vmatprep.subr.mxu0 0.0
  %1118 = vmatpush2.msra.mxu0 0.0
  %1119 = vmatprep.subr.mxu0 0.0
  %1120 = vmatpush2.msra.mxu0 0.0
  %1121 = vmatprep.subr.mxu0 0.0
  %1122 = vmatpush2.msra.mxu0 0.0
  %1123 = vmatprep.subr.mxu0 0.0
  %1124 = vmatpush2.msra.mxu0 0.0
  %1125 = vmatprep.subr.mxu0 0.0
  %1126 = vmatpush2.msra.mxu0 0.0
  %1127 = vmatprep.subr.mxu0 0.0
  %1128 = vmatpush2.msra.mxu0 0.0
  %1129 = vmatprep.subr.mxu0 0.0
  %1130 = vmatpush2.msra.mxu0 0.0
  %1131 = vmatprep.mubr.f32.mxu0 0.0
  %1132 = vmatmul.mubr.f32.gmra.mxu0 %v1051
  %v1133 = vpop.f32.mrf.mxu0
  %v1134 = vadd.f32 0.0, %v1133
  %v1135 = vpop.f32.mrf.mxu0
  %1136 = vmatprep.mubr.f32.mxu0 0.0
  %1137 = vmatmul.mubr.f32.gmra.mxu0 %v1052
  %v1138 = vpop.f32.mrf.mxu0
  %v1139 = vadd.f32 0.0, %v1138
  %v1140 = vpop.f32.mrf.mxu0
  %1141 = vmatprep.mubr.f32.mxu0 0.0
  %1142 = vmatmul.mubr.f32.gmra.mxu0 %v1053
  %v1143 = vpop.f32.mrf.mxu0
  %v1144 = vadd.f32 0.0, %v1143
  %v1145 = vpop.f32.mrf.mxu0
  %1146 = vmatprep.mubr.f32.mxu0 0.0
  %1147 = vmatmul.mubr.f32.gmra.mxu0 %v1054
  %v1148 = vpop.f32.mrf.mxu0
  %v1149 = vadd.f32 0.0, %v1148
  %v1150 = vpop.f32.mrf.mxu0
  %1151 = vmatprep.mubr.f32.mxu0 0.0
  %1152 = vmatmul.mubr.f32.gmra.mxu0 %v1055
  %v1153 = vpop.f32.mrf.mxu0
  %v1154 = vadd.f32 0.0, %v1153
  %v1155 = vpop.f32.mrf.mxu0
  %1156 = vmatprep.mubr.f32.mxu0 0.0
  %1157 = vmatmul.mubr.f32.gmra.mxu0 %v1056
  %v1158 = vpop.f32.mrf.mxu0
  %v1159 = vadd.f32 0.0, %v1158
  %v1160 = vpop.f32.mrf.mxu0
  %1161 = vmatprep.mubr.f32.mxu0 0.0
  %1162 = vmatmul.mubr.f32.gmra.mxu0 %v1057
  %v1163 = vpop.f32.mrf.mxu0
  %v1164 = vadd.f32 0.0, %v1163
  %v1165 = vpop.f32.mrf.mxu0
  %1166 = vmatprep.mubr.f32.mxu0 0.0
  %1167 = vmatmul.mubr.f32.gmra.mxu0 %v1058
  %v1168 = vpop.f32.mrf.mxu0
  %v1169 = vadd.f32 0.0, %v1168
  %v1170 = vpop.f32.mrf.mxu0
  %1171 = vmatprep.mubr.f32.mxu0 0.0
  %1172 = vmatmul.mubr.f32.gmra.mxu0 %v1059
  %v1173 = vpop.f32.mrf.mxu0
  %v1174 = vadd.f32 0.0, %v1173
  %v1175 = vpop.f32.mrf.mxu0
  %1176 = vmatprep.mubr.f32.mxu0 0.0
  %1177 = vmatmul.mubr.f32.gmra.mxu0 %v1060
  %v1178 = vpop.f32.mrf.mxu0
  %v1179 = vadd.f32 0.0, %v1178
  %v1180 = vpop.f32.mrf.mxu0
  %1181 = vmatprep.mubr.f32.mxu0 0.0
  %1182 = vmatmul.mubr.f32.gmra.mxu0 %v1061
  %v1183 = vpop.f32.mrf.mxu0
  %v1184 = vadd.f32 0.0, %v1183
  %v1185 = vpop.f32.mrf.mxu0
  %1186 = vmatprep.mubr.f32.mxu0 0.0
  %1187 = vmatmul.mubr.f32.gmra.mxu0 %v1062
  %v1188 = vpop.f32.mrf.mxu0
  %v1189 = vadd.f32 0.0, %v1188
  %v1190 = vpop.f32.mrf.mxu0
  %1191 = vmatprep.mubr.f32.mxu0 0.0
  %1192 = vmatmul.mubr.f32.gmra.mxu0 %v1063
  %v1193 = vpop.f32.mrf.mxu0
  %v1194 = vadd.f32 0.0, %v1193
  %v1195 = vpop.f32.mrf.mxu0
  %1196 = vmatprep.mubr.f32.mxu0 0.0
  %1197 = vmatmul.mubr.f32.gmra.mxu0 %v1064
  %v1198 = vpop.f32.mrf.mxu0
  %v1199 = vadd.f32 0.0, %v1198
  %v1200 = vpop.f32.mrf.mxu0
  %1201 = vmatprep.mubr.f32.mxu0 0.0
  %1202 = vmatmul.mubr.f32.gmra.mxu0 %v1065
  %v1203 = vpop.f32.mrf.mxu0
  %v1204 = vadd.f32 0.0, %v1203
  %v1205 = vpop.f32.mrf.mxu0
  %1206 = vmatprep.mubr.f32.mxu0 0.0
  %1207 = vmatmul.mubr.f32.gmra.mxu0 %v1066
  %v1208 = vpop.f32.mrf.mxu0
  %v1209 = vadd.f32 0.0, %v1208
  %v1210 = vpop.f32.mrf.mxu0
  %1211 = vdwg.mxu0
  %s1212 = scalar_lea.vmem %s4, 64
  %v1213 = vld [vmem:[%s1212] sm:$0xff]
  %v1214 = vld [vmem:[%s1212 + $0x8] sm:$0xff]
  %v1215 = vld [vmem:[%s1212 + $0x10] sm:$0xff]
  %v1216 = vld [vmem:[%s1212 + $0x18] sm:$0xff]
  %v1218 = vsel %vm458, %v1134, 0
  %v1221 = vsel %vm458, %v1139, 0
  %v1224 = vsel %vm458, %v1144, 0
  %v1227 = vsel %vm458, %v1149, 0
  %v1230 = vsel %vm458, %v1154, 0
  %v1233 = vsel %vm458, %v1159, 0
  %v1236 = vsel %vm458, %v1164, 0
  %v1239 = vsel %vm458, %v1169, 0
  %v1242 = vsel %vm458, %v1174, 0
  %v1245 = vsel %vm458, %v1179, 0
  %v1248 = vsel %vm458, %v1184, 0
  %v1251 = vsel %vm458, %v1189, 0
  %v1254 = vsel %vm458, %v1194, 0
  %v1257 = vsel %vm458, %v1199, 0
  %v1260 = vsel %vm458, %v1204, 0
  %v1263 = vsel %vm458, %v1209, 0
  %1265 = vmatprep.subr.mxu0 0.0
  %1266 = vmatpush1.msra.mxu0 0.0
  %1267 = vmatprep.subr.mxu0 0.0
  %1268 = vmatpush1.msra.mxu0 0.0
  %1269 = vmatprep.subr.mxu0 0.0
  %1270 = vmatpush1.msra.mxu0 0.0
  %1271 = vmatprep.subr.mxu0 0.0
  %1272 = vmatpush1.msra.mxu0 0.0
  %1273 = vmatprep.subr.mxu0 0.0
  %1274 = vmatpush1.msra.mxu0 0.0
  %1275 = vmatprep.subr.mxu0 0.0
  %1276 = vmatpush1.msra.mxu0 0.0
  %1277 = vmatprep.subr.mxu0 0.0
  %1278 = vmatpush1.msra.mxu0 0.0
  %1279 = vmatprep.subr.mxu0 0.0
  %1280 = vmatpush1.msra.mxu0 0.0
  %1281 = vmatprep.subr.mxu0 0.0
  %1282 = vmatpush1.msra.mxu0 0.0
  %1283 = vmatprep.subr.mxu0 0.0
  %1284 = vmatpush1.msra.mxu0 0.0
  %1285 = vmatprep.subr.mxu0 0.0
  %1286 = vmatpush1.msra.mxu0 0.0
  %1287 = vmatprep.subr.mxu0 0.0
  %1288 = vmatpush1.msra.mxu0 0.0
  %1289 = vmatprep.subr.mxu0 0.0
  %1290 = vmatpush1.msra.mxu0 %v1216
  %1291 = vmatprep.subr.mxu0 0.0
  %1292 = vmatpush1.msra.mxu0 %v1215
  %1293 = vmatprep.subr.mxu0 0.0
  %1294 = vmatpush1.msra.mxu0 %v1214
  %1295 = vmatprep.subr.mxu0 0.0
  %1296 = vmatpush1.msra.mxu0 %v1213
  %1297 = vmatprep.subr.mxu0 0.0
  %1298 = vmatpush2.msra.mxu0 0.0
  %1299 = vmatprep.subr.mxu0 0.0
  %1300 = vmatpush2.msra.mxu0 0.0
  %1301 = vmatprep.subr.mxu0 0.0
  %1302 = vmatpush2.msra.mxu0 0.0
  %1303 = vmatprep.subr.mxu0 0.0
  %1304 = vmatpush2.msra.mxu0 0.0
  %1305 = vmatprep.subr.mxu0 0.0
  %1306 = vmatpush2.msra.mxu0 0.0
  %1307 = vmatprep.subr.mxu0 0.0
  %1308 = vmatpush2.msra.mxu0 0.0
  %1309 = vmatprep.subr.mxu0 0.0
  %1310 = vmatpush2.msra.mxu0 0.0
  %1311 = vmatprep.subr.mxu0 0.0
  %1312 = vmatpush2.msra.mxu0 0.0
  %1313 = vmatprep.subr.mxu0 0.0
  %1314 = vmatpush2.msra.mxu0 0.0
  %1315 = vmatprep.subr.mxu0 0.0
  %1316 = vmatpush2.msra.mxu0 0.0
  %1317 = vmatprep.subr.mxu0 0.0
  %1318 = vmatpush2.msra.mxu0 0.0
  %1319 = vmatprep.subr.mxu0 0.0
  %1320 = vmatpush2.msra.mxu0 0.0
  %1321 = vmatprep.subr.mxu0 0.0
  %1322 = vmatpush2.msra.mxu0 0.0
  %1323 = vmatprep.subr.mxu0 0.0
  %1324 = vmatpush2.msra.mxu0 0.0
  %1325 = vmatprep.subr.mxu0 0.0
  %1326 = vmatpush2.msra.mxu0 0.0
  %1327 = vmatprep.subr.mxu0 0.0
  %1328 = vmatpush2.msra.mxu0 0.0
  %1329 = vmatprep.mubr.f32.mxu0 0.0
  %1330 = vmatmul.mubr.f32.gmra.mxu0 %v1218
  %v1331 = vpop.f32.mrf.mxu0
  %v1332 = vadd.f32 0.0, %v1331
  %v1333 = vpop.f32.mrf.mxu0
  %1334 = vmatprep.mubr.f32.mxu0 0.0
  %1335 = vmatmul.mubr.f32.gmra.mxu0 %v1221
  %v1336 = vpop.f32.mrf.mxu0
  %v1337 = vadd.f32 0.0, %v1336
  %v1338 = vpop.f32.mrf.mxu0
  %1339 = vmatprep.mubr.f32.mxu0 0.0
  %1340 = vmatmul.mubr.f32.gmra.mxu0 %v1224
  %v1341 = vpop.f32.mrf.mxu0
  %v1342 = vadd.f32 0.0, %v1341
  %v1343 = vpop.f32.mrf.mxu0
  %1344 = vmatprep.mubr.f32.mxu0 0.0
  %1345 = vmatmul.mubr.f32.gmra.mxu0 %v1227
  %v1346 = vpop.f32.mrf.mxu0
  %v1347 = vadd.f32 0.0, %v1346
  %v1348 = vpop.f32.mrf.mxu0
  %1349 = vmatprep.mubr.f32.mxu0 0.0
  %1350 = vmatmul.mubr.f32.gmra.mxu0 %v1230
  %v1351 = vpop.f32.mrf.mxu0
  %v1352 = vadd.f32 0.0, %v1351
  %v1353 = vpop.f32.mrf.mxu0
  %1354 = vmatprep.mubr.f32.mxu0 0.0
  %1355 = vmatmul.mubr.f32.gmra.mxu0 %v1233
  %v1356 = vpop.f32.mrf.mxu0
  %v1357 = vadd.f32 0.0, %v1356
  %v1358 = vpop.f32.mrf.mxu0
  %1359 = vmatprep.mubr.f32.mxu0 0.0
  %1360 = vmatmul.mubr.f32.gmra.mxu0 %v1236
  %v1361 = vpop.f32.mrf.mxu0
  %v1362 = vadd.f32 0.0, %v1361
  %v1363 = vpop.f32.mrf.mxu0
  %1364 = vmatprep.mubr.f32.mxu0 0.0
  %1365 = vmatmul.mubr.f32.gmra.mxu0 %v1239
  %v1366 = vpop.f32.mrf.mxu0
  %v1367 = vadd.f32 0.0, %v1366
  %v1368 = vpop.f32.mrf.mxu0
  %1369 = vmatprep.mubr.f32.mxu0 0.0
  %1370 = vmatmul.mubr.f32.gmra.mxu0 %v1242
  %v1371 = vpop.f32.mrf.mxu0
  %v1372 = vadd.f32 0.0, %v1371
  %v1373 = vpop.f32.mrf.mxu0
  %1374 = vmatprep.mubr.f32.mxu0 0.0
  %1375 = vmatmul.mubr.f32.gmra.mxu0 %v1245
  %v1376 = vpop.f32.mrf.mxu0
  %v1377 = vadd.f32 0.0, %v1376
  %v1378 = vpop.f32.mrf.mxu0
  %1379 = vmatprep.mubr.f32.mxu0 0.0
  %1380 = vmatmul.mubr.f32.gmra.mxu0 %v1248
  %v1381 = vpop.f32.mrf.mxu0
  %v1382 = vadd.f32 0.0, %v1381
  %v1383 = vpop.f32.mrf.mxu0
  %1384 = vmatprep.mubr.f32.mxu0 0.0
  %1385 = vmatmul.mubr.f32.gmra.mxu0 %v1251
  %v1386 = vpop.f32.mrf.mxu0
  %v1387 = vadd.f32 0.0, %v1386
  %v1388 = vpop.f32.mrf.mxu0
  %1389 = vmatprep.mubr.f32.mxu0 0.0
  %1390 = vmatmul.mubr.f32.gmra.mxu0 %v1254
  %v1391 = vpop.f32.mrf.mxu0
  %v1392 = vadd.f32 0.0, %v1391
  %v1393 = vpop.f32.mrf.mxu0
  %1394 = vmatprep.mubr.f32.mxu0 0.0
  %1395 = vmatmul.mubr.f32.gmra.mxu0 %v1257
  %v1396 = vpop.f32.mrf.mxu0
  %v1397 = vadd.f32 0.0, %v1396
  %v1398 = vpop.f32.mrf.mxu0
  %1399 = vmatprep.mubr.f32.mxu0 0.0
  %1400 = vmatmul.mubr.f32.gmra.mxu0 %v1260
  %v1401 = vpop.f32.mrf.mxu0
  %v1402 = vadd.f32 0.0, %v1401
  %v1403 = vpop.f32.mrf.mxu0
  %1404 = vmatprep.mubr.f32.mxu0 0.0
  %1405 = vmatmul.mubr.f32.gmra.mxu0 %v1263
  %v1406 = vpop.f32.mrf.mxu0
  %v1407 = vadd.f32 0.0, %v1406
  %v1408 = vpop.f32.mrf.mxu0
  %1409 = vdwg.mxu0
  %v1410 = vadd.f32 %v1034, %v1332
  %v1411 = vadd.f32 %v1035, %v1337
  %v1412 = vadd.f32 %v1036, %v1342
  %v1413 = vadd.f32 %v1037, %v1347
  %v1414 = vadd.f32 %v1038, %v1352
  %v1415 = vadd.f32 %v1039, %v1357
  %v1416 = vadd.f32 %v1040, %v1362
  %v1417 = vadd.f32 %v1041, %v1367
  %v1418 = vadd.f32 %v1042, %v1372
  %v1419 = vadd.f32 %v1043, %v1377
  %v1420 = vadd.f32 %v1044, %v1382
  %v1421 = vadd.f32 %v1045, %v1387
  %v1422 = vadd.f32 %v1046, %v1392
  %v1423 = vadd.f32 %v1047, %v1397
  %v1424 = vadd.f32 %v1048, %v1402
  %v1425 = vadd.f32 %v1049, %v1407
  %s1426 = scalar_lea.vmem %s1, 896
  %v1427 = vld [vmem:[%s1426] sm:$0xff]
  %v1428 = vld [vmem:[%s1426 + $0x8] sm:$0xff]
  %v1429 = vld [vmem:[%s1426 + $0x10] sm:$0xff]
  %v1430 = vld [vmem:[%s1426 + $0x18] sm:$0xff]
  %v1431 = vld [vmem:[%s1426 + $0x20] sm:$0xff]
  %v1432 = vld [vmem:[%s1426 + $0x28] sm:$0xff]
  %v1433 = vld [vmem:[%s1426 + $0x30] sm:$0xff]
  %v1434 = vld [vmem:[%s1426 + $0x38] sm:$0xff]
  %v1435 = vld [vmem:[%s1426 + $0x40] sm:$0xff]
  %v1436 = vld [vmem:[%s1426 + $0x48] sm:$0xff]
  %v1437 = vld [vmem:[%s1426 + $0x50] sm:$0xff]
  %v1438 = vld [vmem:[%s1426 + $0x58] sm:$0xff]
  %v1439 = vld [vmem:[%s1426 + $0x60] sm:$0xff]
  %v1440 = vld [vmem:[%s1426 + $0x68] sm:$0xff]
  %v1441 = vld [vmem:[%s1426 + $0x70] sm:$0xff]
  %v1442 = vld [vmem:[%s1426 + $0x78] sm:$0xff]
  %1443 = vmatprep.subr.mxu0 0.0
  %1444 = vmatpush1.msra.mxu0 %v290
  %1445 = vmatprep.subr.mxu0 0.0
  %1446 = vmatpush1.msra.mxu0 %v289
  %1447 = vmatprep.subr.mxu0 0.0
  %1448 = vmatpush1.msra.mxu0 %v288
  %1449 = vmatprep.subr.mxu0 0.0
  %1450 = vmatpush1.msra.mxu0 %v287
  %1451 = vmatprep.subr.mxu0 0.0
  %1452 = vmatpush1.msra.mxu0 %v286
  %1453 = vmatprep.subr.mxu0 0.0
  %1454 = vmatpush1.msra.mxu0 %v285
  %1455 = vmatprep.subr.mxu0 0.0
  %1456 = vmatpush1.msra.mxu0 %v284
  %1457 = vmatprep.subr.mxu0 0.0
  %1458 = vmatpush1.msra.mxu0 %v283
  %1459 = vmatprep.subr.mxu0 0.0
  %1460 = vmatpush1.msra.mxu0 %v282
  %1461 = vmatprep.subr.mxu0 0.0
  %1462 = vmatpush1.msra.mxu0 %v281
  %1463 = vmatprep.subr.mxu0 0.0
  %1464 = vmatpush1.msra.mxu0 %v280
  %1465 = vmatprep.subr.mxu0 0.0
  %1466 = vmatpush1.msra.mxu0 %v279
  %1467 = vmatprep.subr.mxu0 0.0
  %1468 = vmatpush1.msra.mxu0 %v278
  %1469 = vmatprep.subr.mxu0 0.0
  %1470 = vmatpush1.msra.mxu0 %v277
  %1471 = vmatprep.subr.mxu0 0.0
  %1472 = vmatpush1.msra.mxu0 %v276
  %1473 = vmatprep.subr.mxu0 0.0
  %1474 = vmatpush1.msra.mxu0 %v275
  %1475 = vmatprep.subr.mxu0 0.0
  %1476 = vmatpush2.msra.mxu0 0.0
  %1477 = vmatprep.subr.mxu0 0.0
  %1478 = vmatpush2.msra.mxu0 0.0
  %1479 = vmatprep.subr.mxu0 0.0
  %1480 = vmatpush2.msra.mxu0 0.0
  %1481 = vmatprep.subr.mxu0 0.0
  %1482 = vmatpush2.msra.mxu0 0.0
  %1483 = vmatprep.subr.mxu0 0.0
  %1484 = vmatpush2.msra.mxu0 0.0
  %1485 = vmatprep.subr.mxu0 0.0
  %1486 = vmatpush2.msra.mxu0 0.0
  %1487 = vmatprep.subr.mxu0 0.0
  %1488 = vmatpush2.msra.mxu0 0.0
  %1489 = vmatprep.subr.mxu0 0.0
  %1490 = vmatpush2.msra.mxu0 0.0
  %1491 = vmatprep.subr.mxu0 0.0
  %1492 = vmatpush2.msra.mxu0 0.0
  %1493 = vmatprep.subr.mxu0 0.0
  %1494 = vmatpush2.msra.mxu0 0.0
  %1495 = vmatprep.subr.mxu0 0.0
  %1496 = vmatpush2.msra.mxu0 0.0
  %1497 = vmatprep.subr.mxu0 0.0
  %1498 = vmatpush2.msra.mxu0 0.0
  %1499 = vmatprep.subr.mxu0 0.0
  %1500 = vmatpush2.msra.mxu0 0.0
  %1501 = vmatprep.subr.mxu0 0.0
  %1502 = vmatpush2.msra.mxu0 0.0
  %1503 = vmatprep.subr.mxu0 0.0
  %1504 = vmatpush2.msra.mxu0 0.0
  %1505 = vmatprep.subr.mxu0 0.0
  %1506 = vmatpush2.msra.mxu0 0.0
  %1507 = vmatprep.mubr.f32.mxu0 0.0
  %1508 = vmatmul.mubr.f32.gmra.mxu0 %v1427
  %v1509 = vpop.f32.mrf.mxu0
  %v1510 = vadd.f32 0.0, %v1509
  %v1511 = vpop.f32.mrf.mxu0
  %1512 = vmatprep.mubr.f32.mxu0 0.0
  %1513 = vmatmul.mubr.f32.gmra.mxu0 %v1428
  %v1514 = vpop.f32.mrf.mxu0
  %v1515 = vadd.f32 0.0, %v1514
  %v1516 = vpop.f32.mrf.mxu0
  %1517 = vmatprep.mubr.f32.mxu0 0.0
  %1518 = vmatmul.mubr.f32.gmra.mxu0 %v1429
  %v1519 = vpop.f32.mrf.mxu0
  %v1520 = vadd.f32 0.0, %v1519
  %v1521 = vpop.f32.mrf.mxu0
  %1522 = vmatprep.mubr.f32.mxu0 0.0
  %1523 = vmatmul.mubr.f32.gmra.mxu0 %v1430
  %v1524 = vpop.f32.mrf.mxu0
  %v1525 = vadd.f32 0.0, %v1524
  %v1526 = vpop.f32.mrf.mxu0
  %1527 = vmatprep.mubr.f32.mxu0 0.0
  %1528 = vmatmul.mubr.f32.gmra.mxu0 %v1431
  %v1529 = vpop.f32.mrf.mxu0
  %v1530 = vadd.f32 0.0, %v1529
  %v1531 = vpop.f32.mrf.mxu0
  %1532 = vmatprep.mubr.f32.mxu0 0.0
  %1533 = vmatmul.mubr.f32.gmra.mxu0 %v1432
  %v1534 = vpop.f32.mrf.mxu0
  %v1535 = vadd.f32 0.0, %v1534
  %v1536 = vpop.f32.mrf.mxu0
  %1537 = vmatprep.mubr.f32.mxu0 0.0
  %1538 = vmatmul.mubr.f32.gmra.mxu0 %v1433
  %v1539 = vpop.f32.mrf.mxu0
  %v1540 = vadd.f32 0.0, %v1539
  %v1541 = vpop.f32.mrf.mxu0
  %1542 = vmatprep.mubr.f32.mxu0 0.0
  %1543 = vmatmul.mubr.f32.gmra.mxu0 %v1434
  %v1544 = vpop.f32.mrf.mxu0
  %v1545 = vadd.f32 0.0, %v1544
  %v1546 = vpop.f32.mrf.mxu0
  %1547 = vmatprep.mubr.f32.mxu0 0.0
  %1548 = vmatmul.mubr.f32.gmra.mxu0 %v1435
  %v1549 = vpop.f32.mrf.mxu0
  %v1550 = vadd.f32 0.0, %v1549
  %v1551 = vpop.f32.mrf.mxu0
  %1552 = vmatprep.mubr.f32.mxu0 0.0
  %1553 = vmatmul.mubr.f32.gmra.mxu0 %v1436
  %v1554 = vpop.f32.mrf.mxu0
  %v1555 = vadd.f32 0.0, %v1554
  %v1556 = vpop.f32.mrf.mxu0
  %1557 = vmatprep.mubr.f32.mxu0 0.0
  %1558 = vmatmul.mubr.f32.gmra.mxu0 %v1437
  %v1559 = vpop.f32.mrf.mxu0
  %v1560 = vadd.f32 0.0, %v1559
  %v1561 = vpop.f32.mrf.mxu0
  %1562 = vmatprep.mubr.f32.mxu0 0.0
  %1563 = vmatmul.mubr.f32.gmra.mxu0 %v1438
  %v1564 = vpop.f32.mrf.mxu0
  %v1565 = vadd.f32 0.0, %v1564
  %v1566 = vpop.f32.mrf.mxu0
  %1567 = vmatprep.mubr.f32.mxu0 0.0
  %1568 = vmatmul.mubr.f32.gmra.mxu0 %v1439
  %v1569 = vpop.f32.mrf.mxu0
  %v1570 = vadd.f32 0.0, %v1569
  %v1571 = vpop.f32.mrf.mxu0
  %1572 = vmatprep.mubr.f32.mxu0 0.0
  %1573 = vmatmul.mubr.f32.gmra.mxu0 %v1440
  %v1574 = vpop.f32.mrf.mxu0
  %v1575 = vadd.f32 0.0, %v1574
  %v1576 = vpop.f32.mrf.mxu0
  %1577 = vmatprep.mubr.f32.mxu0 0.0
  %1578 = vmatmul.mubr.f32.gmra.mxu0 %v1441
  %v1579 = vpop.f32.mrf.mxu0
  %v1580 = vadd.f32 0.0, %v1579
  %v1581 = vpop.f32.mrf.mxu0
  %1582 = vmatprep.mubr.f32.mxu0 0.0
  %1583 = vmatmul.mubr.f32.gmra.mxu0 %v1442
  %v1584 = vpop.f32.mrf.mxu0
  %v1585 = vadd.f32 0.0, %v1584
  %v1586 = vpop.f32.mrf.mxu0
  %1587 = vdwg.mxu0
  %s1588 = scalar_lea.vmem %s4, 96
  %v1589 = vld [vmem:[%s1588] sm:$0xff]
  %v1590 = vld [vmem:[%s1588 + $0x8] sm:$0xff]
  %v1591 = vld [vmem:[%s1588 + $0x10] sm:$0xff]
  %v1592 = vld [vmem:[%s1588 + $0x18] sm:$0xff]
  %v1594 = vsel %vm458, %v1510, 0
  %v1597 = vsel %vm458, %v1515, 0
  %v1600 = vsel %vm458, %v1520, 0
  %v1603 = vsel %vm458, %v1525, 0
  %v1606 = vsel %vm458, %v1530, 0
  %v1609 = vsel %vm458, %v1535, 0
  %v1612 = vsel %vm458, %v1540, 0
  %v1615 = vsel %vm458, %v1545, 0
  %v1618 = vsel %vm458, %v1550, 0
  %v1621 = vsel %vm458, %v1555, 0
  %v1624 = vsel %vm458, %v1560, 0
  %v1627 = vsel %vm458, %v1565, 0
  %v1630 = vsel %vm458, %v1570, 0
  %v1633 = vsel %vm458, %v1575, 0
  %v1636 = vsel %vm458, %v1580, 0
  %v1639 = vsel %vm458, %v1585, 0
  %1641 = vmatprep.subr.mxu0 0.0
  %1642 = vmatpush1.msra.mxu0 0.0
  %1643 = vmatprep.subr.mxu0 0.0
  %1644 = vmatpush1.msra.mxu0 0.0
  %1645 = vmatprep.subr.mxu0 0.0
  %1646 = vmatpush1.msra.mxu0 0.0
  %1647 = vmatprep.subr.mxu0 0.0
  %1648 = vmatpush1.msra.mxu0 0.0
  %1649 = vmatprep.subr.mxu0 0.0
  %1650 = vmatpush1.msra.mxu0 0.0
  %1651 = vmatprep.subr.mxu0 0.0
  %1652 = vmatpush1.msra.mxu0 0.0
  %1653 = vmatprep.subr.mxu0 0.0
  %1654 = vmatpush1.msra.mxu0 0.0
  %1655 = vmatprep.subr.mxu0 0.0
  %1656 = vmatpush1.msra.mxu0 0.0
  %1657 = vmatprep.subr.mxu0 0.0
  %1658 = vmatpush1.msra.mxu0 0.0
  %1659 = vmatprep.subr.mxu0 0.0
  %1660 = vmatpush1.msra.mxu0 0.0
  %1661 = vmatprep.subr.mxu0 0.0
  %1662 = vmatpush1.msra.mxu0 0.0
  %1663 = vmatprep.subr.mxu0 0.0
  %1664 = vmatpush1.msra.mxu0 0.0
  %1665 = vmatprep.subr.mxu0 0.0
  %1666 = vmatpush1.msra.mxu0 %v1592
  %1667 = vmatprep.subr.mxu0 0.0
  %1668 = vmatpush1.msra.mxu0 %v1591
  %1669 = vmatprep.subr.mxu0 0.0
  %1670 = vmatpush1.msra.mxu0 %v1590
  %1671 = vmatprep.subr.mxu0 0.0
  %1672 = vmatpush1.msra.mxu0 %v1589
  %1673 = vmatprep.subr.mxu0 0.0
  %1674 = vmatpush2.msra.mxu0 0.0
  %1675 = vmatprep.subr.mxu0 0.0
  %1676 = vmatpush2.msra.mxu0 0.0
  %1677 = vmatprep.subr.mxu0 0.0
  %1678 = vmatpush2.msra.mxu0 0.0
  %1679 = vmatprep.subr.mxu0 0.0
  %1680 = vmatpush2.msra.mxu0 0.0
  %1681 = vmatprep.subr.mxu0 0.0
  %1682 = vmatpush2.msra.mxu0 0.0
  %1683 = vmatprep.subr.mxu0 0.0
  %1684 = vmatpush2.msra.mxu0 0.0
  %1685 = vmatprep.subr.mxu0 0.0
  %1686 = vmatpush2.msra.mxu0 0.0
  %1687 = vmatprep.subr.mxu0 0.0
  %1688 = vmatpush2.msra.mxu0 0.0
  %1689 = vmatprep.subr.mxu0 0.0
  %1690 = vmatpush2.msra.mxu0 0.0
  %1691 = vmatprep.subr.mxu0 0.0
  %1692 = vmatpush2.msra.mxu0 0.0
  %1693 = vmatprep.subr.mxu0 0.0
  %1694 = vmatpush2.msra.mxu0 0.0
  %1695 = vmatprep.subr.mxu0 0.0
  %1696 = vmatpush2.msra.mxu0 0.0
  %1697 = vmatprep.subr.mxu0 0.0
  %1698 = vmatpush2.msra.mxu0 0.0
  %1699 = vmatprep.subr.mxu0 0.0
  %1700 = vmatpush2.msra.mxu0 0.0
  %1701 = vmatprep.subr.mxu0 0.0
  %1702 = vmatpush2.msra.mxu0 0.0
  %1703 = vmatprep.subr.mxu0 0.0
  %1704 = vmatpush2.msra.mxu0 0.0
  %1705 = vmatprep.mubr.f32.mxu0 0.0
  %1706 = vmatmul.mubr.f32.gmra.mxu0 %v1594
  %v1707 = vpop.f32.mrf.mxu0
  %v1708 = vadd.f32 0.0, %v1707
  %v1709 = vpop.f32.mrf.mxu0
  %1710 = vmatprep.mubr.f32.mxu0 0.0
  %1711 = vmatmul.mubr.f32.gmra.mxu0 %v1597
  %v1712 = vpop.f32.mrf.mxu0
  %v1713 = vadd.f32 0.0, %v1712
  %v1714 = vpop.f32.mrf.mxu0
  %1715 = vmatprep.mubr.f32.mxu0 0.0
  %1716 = vmatmul.mubr.f32.gmra.mxu0 %v1600
  %v1717 = vpop.f32.mrf.mxu0
  %v1718 = vadd.f32 0.0, %v1717
  %v1719 = vpop.f32.mrf.mxu0
  %1720 = vmatprep.mubr.f32.mxu0 0.0
  %1721 = vmatmul.mubr.f32.gmra.mxu0 %v1603
  %v1722 = vpop.f32.mrf.mxu0
  %v1723 = vadd.f32 0.0, %v1722
  %v1724 = vpop.f32.mrf.mxu0
  %1725 = vmatprep.mubr.f32.mxu0 0.0
  %1726 = vmatmul.mubr.f32.gmra.mxu0 %v1606
  %v1727 = vpop.f32.mrf.mxu0
  %v1728 = vadd.f32 0.0, %v1727
  %v1729 = vpop.f32.mrf.mxu0
  %1730 = vmatprep.mubr.f32.mxu0 0.0
  %1731 = vmatmul.mubr.f32.gmra.mxu0 %v1609
  %v1732 = vpop.f32.mrf.mxu0
  %v1733 = vadd.f32 0.0, %v1732
  %v1734 = vpop.f32.mrf.mxu0
  %1735 = vmatprep.mubr.f32.mxu0 0.0
  %1736 = vmatmul.mubr.f32.gmra.mxu0 %v1612
  %v1737 = vpop.f32.mrf.mxu0
  %v1738 = vadd.f32 0.0, %v1737
  %v1739 = vpop.f32.mrf.mxu0
  %1740 = vmatprep.mubr.f32.mxu0 0.0
  %1741 = vmatmul.mubr.f32.gmra.mxu0 %v1615
  %v1742 = vpop.f32.mrf.mxu0
  %v1743 = vadd.f32 0.0, %v1742
  %v1744 = vpop.f32.mrf.mxu0
  %1745 = vmatprep.mubr.f32.mxu0 0.0
  %1746 = vmatmul.mubr.f32.gmra.mxu0 %v1618
  %v1747 = vpop.f32.mrf.mxu0
  %v1748 = vadd.f32 0.0, %v1747
  %v1749 = vpop.f32.mrf.mxu0
  %1750 = vmatprep.mubr.f32.mxu0 0.0
  %1751 = vmatmul.mubr.f32.gmra.mxu0 %v1621
  %v1752 = vpop.f32.mrf.mxu0
  %v1753 = vadd.f32 0.0, %v1752
  %v1754 = vpop.f32.mrf.mxu0
  %1755 = vmatprep.mubr.f32.mxu0 0.0
  %1756 = vmatmul.mubr.f32.gmra.mxu0 %v1624
  %v1757 = vpop.f32.mrf.mxu0
  %v1758 = vadd.f32 0.0, %v1757
  %v1759 = vpop.f32.mrf.mxu0
  %1760 = vmatprep.mubr.f32.mxu0 0.0
  %1761 = vmatmul.mubr.f32.gmra.mxu0 %v1627
  %v1762 = vpop.f32.mrf.mxu0
  %v1763 = vadd.f32 0.0, %v1762
  %v1764 = vpop.f32.mrf.mxu0
  %1765 = vmatprep.mubr.f32.mxu0 0.0
  %1766 = vmatmul.mubr.f32.gmra.mxu0 %v1630
  %v1767 = vpop.f32.mrf.mxu0
  %v1768 = vadd.f32 0.0, %v1767
  %v1769 = vpop.f32.mrf.mxu0
  %1770 = vmatprep.mubr.f32.mxu0 0.0
  %1771 = vmatmul.mubr.f32.gmra.mxu0 %v1633
  %v1772 = vpop.f32.mrf.mxu0
  %v1773 = vadd.f32 0.0, %v1772
  %v1774 = vpop.f32.mrf.mxu0
  %1775 = vmatprep.mubr.f32.mxu0 0.0
  %1776 = vmatmul.mubr.f32.gmra.mxu0 %v1636
  %v1777 = vpop.f32.mrf.mxu0
  %v1778 = vadd.f32 0.0, %v1777
  %v1779 = vpop.f32.mrf.mxu0
  %1780 = vmatprep.mubr.f32.mxu0 0.0
  %1781 = vmatmul.mubr.f32.gmra.mxu0 %v1639
  %v1782 = vpop.f32.mrf.mxu0
  %v1783 = vadd.f32 0.0, %v1782
  %v1784 = vpop.f32.mrf.mxu0
  %1785 = vdwg.mxu0
  %v1786 = vadd.f32 %v1410, %v1708
  %v1787 = vadd.f32 %v1411, %v1713
  %v1788 = vadd.f32 %v1412, %v1718
  %v1789 = vadd.f32 %v1413, %v1723
  %v1790 = vadd.f32 %v1414, %v1728
  %v1791 = vadd.f32 %v1415, %v1733
  %v1792 = vadd.f32 %v1416, %v1738
  %v1793 = vadd.f32 %v1417, %v1743
  %v1794 = vadd.f32 %v1418, %v1748
  %v1795 = vadd.f32 %v1419, %v1753
  %v1796 = vadd.f32 %v1420, %v1758
  %v1797 = vadd.f32 %v1421, %v1763
  %v1798 = vadd.f32 %v1422, %v1768
  %v1799 = vadd.f32 %v1423, %v1773
  %v1800 = vadd.f32 %v1424, %v1778
  %v1801 = vadd.f32 %v1425, %v1783
  %s1802 = scalar_lea.vmem %s4, 128
  %v1803 = vld [vmem:[%s1802] sm:$0xff]
  %v1804 = vld [vmem:[%s1802 + $0x8] sm:$0xff]
  %v1805 = vld [vmem:[%s1802 + $0x10] sm:$0xff]
  %v1806 = vld [vmem:[%s1802 + $0x18] sm:$0xff]
  %v1808 = vsel %vm458, %v275, 0
  %v1811 = vsel %vm458, %v276, 0
  %v1814 = vsel %vm458, %v277, 0
  %v1817 = vsel %vm458, %v278, 0
  %v1820 = vsel %vm458, %v279, 0
  %v1823 = vsel %vm458, %v280, 0
  %v1826 = vsel %vm458, %v281, 0
  %v1829 = vsel %vm458, %v282, 0
  %v1832 = vsel %vm458, %v283, 0
  %v1835 = vsel %vm458, %v284, 0
  %v1838 = vsel %vm458, %v285, 0
  %v1841 = vsel %vm458, %v286, 0
  %v1844 = vsel %vm458, %v287, 0
  %v1847 = vsel %vm458, %v288, 0
  %v1850 = vsel %vm458, %v289, 0
  %v1853 = vsel %vm458, %v290, 0
  %1855 = vmatprep.subr.mxu0 0.0
  %1856 = vmatpush1.msra.mxu0 0.0
  %1857 = vmatprep.subr.mxu0 0.0
  %1858 = vmatpush1.msra.mxu0 0.0
  %1859 = vmatprep.subr.mxu0 0.0
  %1860 = vmatpush1.msra.mxu0 0.0
  %1861 = vmatprep.subr.mxu0 0.0
  %1862 = vmatpush1.msra.mxu0 0.0
  %1863 = vmatprep.subr.mxu0 0.0
  %1864 = vmatpush1.msra.mxu0 0.0
  %1865 = vmatprep.subr.mxu0 0.0
  %1866 = vmatpush1.msra.mxu0 0.0
  %1867 = vmatprep.subr.mxu0 0.0
  %1868 = vmatpush1.msra.mxu0 0.0
  %1869 = vmatprep.subr.mxu0 0.0
  %1870 = vmatpush1.msra.mxu0 0.0
  %1871 = vmatprep.subr.mxu0 0.0
  %1872 = vmatpush1.msra.mxu0 0.0
  %1873 = vmatprep.subr.mxu0 0.0
  %1874 = vmatpush1.msra.mxu0 0.0
  %1875 = vmatprep.subr.mxu0 0.0
  %1876 = vmatpush1.msra.mxu0 0.0
  %1877 = vmatprep.subr.mxu0 0.0
  %1878 = vmatpush1.msra.mxu0 0.0
  %1879 = vmatprep.subr.mxu0 0.0
  %1880 = vmatpush1.msra.mxu0 %v1806
  %1881 = vmatprep.subr.mxu0 0.0
  %1882 = vmatpush1.msra.mxu0 %v1805
  %1883 = vmatprep.subr.mxu0 0.0
  %1884 = vmatpush1.msra.mxu0 %v1804
  %1885 = vmatprep.subr.mxu0 0.0
  %1886 = vmatpush1.msra.mxu0 %v1803
  %1887 = vmatprep.subr.mxu0 0.0
  %1888 = vmatpush2.msra.mxu0 0.0
  %1889 = vmatprep.subr.mxu0 0.0
  %1890 = vmatpush2.msra.mxu0 0.0
  %1891 = vmatprep.subr.mxu0 0.0
  %1892 = vmatpush2.msra.mxu0 0.0
  %1893 = vmatprep.subr.mxu0 0.0
  %1894 = vmatpush2.msra.mxu0 0.0
  %1895 = vmatprep.subr.mxu0 0.0
  %1896 = vmatpush2.msra.mxu0 0.0
  %1897 = vmatprep.subr.mxu0 0.0
  %1898 = vmatpush2.msra.mxu0 0.0
  %1899 = vmatprep.subr.mxu0 0.0
  %1900 = vmatpush2.msra.mxu0 0.0
  %1901 = vmatprep.subr.mxu0 0.0
  %1902 = vmatpush2.msra.mxu0 0.0
  %1903 = vmatprep.subr.mxu0 0.0
  %1904 = vmatpush2.msra.mxu0 0.0
  %1905 = vmatprep.subr.mxu0 0.0
  %1906 = vmatpush2.msra.mxu0 0.0
  %1907 = vmatprep.subr.mxu0 0.0
  %1908 = vmatpush2.msra.mxu0 0.0
  %1909 = vmatprep.subr.mxu0 0.0
  %1910 = vmatpush2.msra.mxu0 0.0
  %1911 = vmatprep.subr.mxu0 0.0
  %1912 = vmatpush2.msra.mxu0 0.0
  %1913 = vmatprep.subr.mxu0 0.0
  %1914 = vmatpush2.msra.mxu0 0.0
  %1915 = vmatprep.subr.mxu0 0.0
  %1916 = vmatpush2.msra.mxu0 0.0
  %1917 = vmatprep.subr.mxu0 0.0
  %1918 = vmatpush2.msra.mxu0 0.0
  %1919 = vmatprep.mubr.f32.mxu0 0.0
  %1920 = vmatmul.mubr.f32.gmra.mxu0 %v1808
  %v1921 = vpop.f32.mrf.mxu0
  %v1922 = vadd.f32 0.0, %v1921
  %v1923 = vpop.f32.mrf.mxu0
  %1924 = vmatprep.mubr.f32.mxu0 0.0
  %1925 = vmatmul.mubr.f32.gmra.mxu0 %v1811
  %v1926 = vpop.f32.mrf.mxu0
  %v1927 = vadd.f32 0.0, %v1926
  %v1928 = vpop.f32.mrf.mxu0
  %1929 = vmatprep.mubr.f32.mxu0 0.0
  %1930 = vmatmul.mubr.f32.gmra.mxu0 %v1814
  %v1931 = vpop.f32.mrf.mxu0
  %v1932 = vadd.f32 0.0, %v1931
  %v1933 = vpop.f32.mrf.mxu0
  %1934 = vmatprep.mubr.f32.mxu0 0.0
  %1935 = vmatmul.mubr.f32.gmra.mxu0 %v1817
  %v1936 = vpop.f32.mrf.mxu0
  %v1937 = vadd.f32 0.0, %v1936
  %v1938 = vpop.f32.mrf.mxu0
  %1939 = vmatprep.mubr.f32.mxu0 0.0
  %1940 = vmatmul.mubr.f32.gmra.mxu0 %v1820
  %v1941 = vpop.f32.mrf.mxu0
  %v1942 = vadd.f32 0.0, %v1941
  %v1943 = vpop.f32.mrf.mxu0
  %1944 = vmatprep.mubr.f32.mxu0 0.0
  %1945 = vmatmul.mubr.f32.gmra.mxu0 %v1823
  %v1946 = vpop.f32.mrf.mxu0
  %v1947 = vadd.f32 0.0, %v1946
  %v1948 = vpop.f32.mrf.mxu0
  %1949 = vmatprep.mubr.f32.mxu0 0.0
  %1950 = vmatmul.mubr.f32.gmra.mxu0 %v1826
  %v1951 = vpop.f32.mrf.mxu0
  %v1952 = vadd.f32 0.0, %v1951
  %v1953 = vpop.f32.mrf.mxu0
  %1954 = vmatprep.mubr.f32.mxu0 0.0
  %1955 = vmatmul.mubr.f32.gmra.mxu0 %v1829
  %v1956 = vpop.f32.mrf.mxu0
  %v1957 = vadd.f32 0.0, %v1956
  %v1958 = vpop.f32.mrf.mxu0
  %1959 = vmatprep.mubr.f32.mxu0 0.0
  %1960 = vmatmul.mubr.f32.gmra.mxu0 %v1832
  %v1961 = vpop.f32.mrf.mxu0
  %v1962 = vadd.f32 0.0, %v1961
  %v1963 = vpop.f32.mrf.mxu0
  %1964 = vmatprep.mubr.f32.mxu0 0.0
  %1965 = vmatmul.mubr.f32.gmra.mxu0 %v1835
  %v1966 = vpop.f32.mrf.mxu0
  %v1967 = vadd.f32 0.0, %v1966
  %v1968 = vpop.f32.mrf.mxu0
  %1969 = vmatprep.mubr.f32.mxu0 0.0
  %1970 = vmatmul.mubr.f32.gmra.mxu0 %v1838
  %v1971 = vpop.f32.mrf.mxu0
  %v1972 = vadd.f32 0.0, %v1971
  %v1973 = vpop.f32.mrf.mxu0
  %1974 = vmatprep.mubr.f32.mxu0 0.0
  %1975 = vmatmul.mubr.f32.gmra.mxu0 %v1841
  %v1976 = vpop.f32.mrf.mxu0
  %v1977 = vadd.f32 0.0, %v1976
  %v1978 = vpop.f32.mrf.mxu0
  %1979 = vmatprep.mubr.f32.mxu0 0.0
  %1980 = vmatmul.mubr.f32.gmra.mxu0 %v1844
  %v1981 = vpop.f32.mrf.mxu0
  %v1982 = vadd.f32 0.0, %v1981
  %v1983 = vpop.f32.mrf.mxu0
  %1984 = vmatprep.mubr.f32.mxu0 0.0
  %1985 = vmatmul.mubr.f32.gmra.mxu0 %v1847
  %v1986 = vpop.f32.mrf.mxu0
  %v1987 = vadd.f32 0.0, %v1986
  %v1988 = vpop.f32.mrf.mxu0
  %1989 = vmatprep.mubr.f32.mxu0 0.0
  %1990 = vmatmul.mubr.f32.gmra.mxu0 %v1850
  %v1991 = vpop.f32.mrf.mxu0
  %v1992 = vadd.f32 0.0, %v1991
  %v1993 = vpop.f32.mrf.mxu0
  %1994 = vmatprep.mubr.f32.mxu0 0.0
  %1995 = vmatmul.mubr.f32.gmra.mxu0 %v1853
  %v1996 = vpop.f32.mrf.mxu0
  %v1997 = vadd.f32 0.0, %v1996
  %v1998 = vpop.f32.mrf.mxu0
  %1999 = vdwg.mxu0
  %v2000 = vadd.f32 %v1786, %v1922
  %v2001 = vadd.f32 %v1787, %v1927
  %v2002 = vadd.f32 %v1788, %v1932
  %v2003 = vadd.f32 %v1789, %v1937
  %v2004 = vadd.f32 %v1790, %v1942
  %v2005 = vadd.f32 %v1791, %v1947
  %v2006 = vadd.f32 %v1792, %v1952
  %v2007 = vadd.f32 %v1793, %v1957
  %v2008 = vadd.f32 %v1794, %v1962
  %v2009 = vadd.f32 %v1795, %v1967
  %v2010 = vadd.f32 %v1796, %v1972
  %v2011 = vadd.f32 %v1797, %v1977
  %v2012 = vadd.f32 %v1798, %v1982
  %v2013 = vadd.f32 %v1799, %v1987
  %v2014 = vadd.f32 %v1800, %v1992
  %v2015 = vadd.f32 %v1801, %v1997
  %s2016 = scalar_lea.vmem %s1, 1024
  %v2017 = vld [vmem:[%s2016] sm:$0xff]
  %v2018 = vld [vmem:[%s2016 + $0x8] sm:$0xff]
  %v2019 = vld [vmem:[%s2016 + $0x10] sm:$0xff]
  %v2020 = vld [vmem:[%s2016 + $0x18] sm:$0xff]
  %v2021 = vld [vmem:[%s2016 + $0x20] sm:$0xff]
  %v2022 = vld [vmem:[%s2016 + $0x28] sm:$0xff]
  %v2023 = vld [vmem:[%s2016 + $0x30] sm:$0xff]
  %v2024 = vld [vmem:[%s2016 + $0x38] sm:$0xff]
  %v2025 = vld [vmem:[%s2016 + $0x40] sm:$0xff]
  %v2026 = vld [vmem:[%s2016 + $0x48] sm:$0xff]
  %v2027 = vld [vmem:[%s2016 + $0x50] sm:$0xff]
  %v2028 = vld [vmem:[%s2016 + $0x58] sm:$0xff]
  %v2029 = vld [vmem:[%s2016 + $0x60] sm:$0xff]
  %v2030 = vld [vmem:[%s2016 + $0x68] sm:$0xff]
  %v2031 = vld [vmem:[%s2016 + $0x70] sm:$0xff]
  %v2032 = vld [vmem:[%s2016 + $0x78] sm:$0xff]
  %2033 = vmatprep.subr.mxu0 0.0
  %2034 = vmatpush1.msra.mxu0 %v290
  %2035 = vmatprep.subr.mxu0 0.0
  %2036 = vmatpush1.msra.mxu0 %v289
  %2037 = vmatprep.subr.mxu0 0.0
  %2038 = vmatpush1.msra.mxu0 %v288
  %2039 = vmatprep.subr.mxu0 0.0
  %2040 = vmatpush1.msra.mxu0 %v287
  %2041 = vmatprep.subr.mxu0 0.0
  %2042 = vmatpush1.msra.mxu0 %v286
  %2043 = vmatprep.subr.mxu0 0.0
  %2044 = vmatpush1.msra.mxu0 %v285
  %2045 = vmatprep.subr.mxu0 0.0
  %2046 = vmatpush1.msra.mxu0 %v284
  %2047 = vmatprep.subr.mxu0 0.0
  %2048 = vmatpush1.msra.mxu0 %v283
  %2049 = vmatprep.subr.mxu0 0.0
  %2050 = vmatpush1.msra.mxu0 %v282
  %2051 = vmatprep.subr.mxu0 0.0
  %2052 = vmatpush1.msra.mxu0 %v281
  %2053 = vmatprep.subr.mxu0 0.0
  %2054 = vmatpush1.msra.mxu0 %v280
  %2055 = vmatprep.subr.mxu0 0.0
  %2056 = vmatpush1.msra.mxu0 %v279
  %2057 = vmatprep.subr.mxu0 0.0
  %2058 = vmatpush1.msra.mxu0 %v278
  %2059 = vmatprep.subr.mxu0 0.0
  %2060 = vmatpush1.msra.mxu0 %v277
  %2061 = vmatprep.subr.mxu0 0.0
  %2062 = vmatpush1.msra.mxu0 %v276
  %2063 = vmatprep.subr.mxu0 0.0
  %2064 = vmatpush1.msra.mxu0 %v275
  %2065 = vmatprep.subr.mxu0 0.0
  %2066 = vmatpush2.msra.mxu0 0.0
  %2067 = vmatprep.subr.mxu0 0.0
  %2068 = vmatpush2.msra.mxu0 0.0
  %2069 = vmatprep.subr.mxu0 0.0
  %2070 = vmatpush2.msra.mxu0 0.0
  %2071 = vmatprep.subr.mxu0 0.0
  %2072 = vmatpush2.msra.mxu0 0.0
  %2073 = vmatprep.subr.mxu0 0.0
  %2074 = vmatpush2.msra.mxu0 0.0
  %2075 = vmatprep.subr.mxu0 0.0
  %2076 = vmatpush2.msra.mxu0 0.0
  %2077 = vmatprep.subr.mxu0 0.0
  %2078 = vmatpush2.msra.mxu0 0.0
  %2079 = vmatprep.subr.mxu0 0.0
  %2080 = vmatpush2.msra.mxu0 0.0
  %2081 = vmatprep.subr.mxu0 0.0
  %2082 = vmatpush2.msra.mxu0 0.0
  %2083 = vmatprep.subr.mxu0 0.0
  %2084 = vmatpush2.msra.mxu0 0.0
  %2085 = vmatprep.subr.mxu0 0.0
  %2086 = vmatpush2.msra.mxu0 0.0
  %2087 = vmatprep.subr.mxu0 0.0
  %2088 = vmatpush2.msra.mxu0 0.0
  %2089 = vmatprep.subr.mxu0 0.0
  %2090 = vmatpush2.msra.mxu0 0.0
  %2091 = vmatprep.subr.mxu0 0.0
  %2092 = vmatpush2.msra.mxu0 0.0
  %2093 = vmatprep.subr.mxu0 0.0
  %2094 = vmatpush2.msra.mxu0 0.0
  %2095 = vmatprep.subr.mxu0 0.0
  %2096 = vmatpush2.msra.mxu0 0.0
  %2097 = vmatprep.mubr.f32.mxu0 0.0
  %2098 = vmatmul.mubr.f32.gmra.mxu0 %v2017
  %v2099 = vpop.f32.mrf.mxu0
  %v2100 = vadd.f32 0.0, %v2099
  %v2101 = vpop.f32.mrf.mxu0
  %2102 = vmatprep.mubr.f32.mxu0 0.0
  %2103 = vmatmul.mubr.f32.gmra.mxu0 %v2018
  %v2104 = vpop.f32.mrf.mxu0
  %v2105 = vadd.f32 0.0, %v2104
  %v2106 = vpop.f32.mrf.mxu0
  %2107 = vmatprep.mubr.f32.mxu0 0.0
  %2108 = vmatmul.mubr.f32.gmra.mxu0 %v2019
  %v2109 = vpop.f32.mrf.mxu0
  %v2110 = vadd.f32 0.0, %v2109
  %v2111 = vpop.f32.mrf.mxu0
  %2112 = vmatprep.mubr.f32.mxu0 0.0
  %2113 = vmatmul.mubr.f32.gmra.mxu0 %v2020
  %v2114 = vpop.f32.mrf.mxu0
  %v2115 = vadd.f32 0.0, %v2114
  %v2116 = vpop.f32.mrf.mxu0
  %2117 = vmatprep.mubr.f32.mxu0 0.0
  %2118 = vmatmul.mubr.f32.gmra.mxu0 %v2021
  %v2119 = vpop.f32.mrf.mxu0
  %v2120 = vadd.f32 0.0, %v2119
  %v2121 = vpop.f32.mrf.mxu0
  %2122 = vmatprep.mubr.f32.mxu0 0.0
  %2123 = vmatmul.mubr.f32.gmra.mxu0 %v2022
  %v2124 = vpop.f32.mrf.mxu0
  %v2125 = vadd.f32 0.0, %v2124
  %v2126 = vpop.f32.mrf.mxu0
  %2127 = vmatprep.mubr.f32.mxu0 0.0
  %2128 = vmatmul.mubr.f32.gmra.mxu0 %v2023
  %v2129 = vpop.f32.mrf.mxu0
  %v2130 = vadd.f32 0.0, %v2129
  %v2131 = vpop.f32.mrf.mxu0
  %2132 = vmatprep.mubr.f32.mxu0 0.0
  %2133 = vmatmul.mubr.f32.gmra.mxu0 %v2024
  %v2134 = vpop.f32.mrf.mxu0
  %v2135 = vadd.f32 0.0, %v2134
  %v2136 = vpop.f32.mrf.mxu0
  %2137 = vmatprep.mubr.f32.mxu0 0.0
  %2138 = vmatmul.mubr.f32.gmra.mxu0 %v2025
  %v2139 = vpop.f32.mrf.mxu0
  %v2140 = vadd.f32 0.0, %v2139
  %v2141 = vpop.f32.mrf.mxu0
  %2142 = vmatprep.mubr.f32.mxu0 0.0
  %2143 = vmatmul.mubr.f32.gmra.mxu0 %v2026
  %v2144 = vpop.f32.mrf.mxu0
  %v2145 = vadd.f32 0.0, %v2144
  %v2146 = vpop.f32.mrf.mxu0
  %2147 = vmatprep.mubr.f32.mxu0 0.0
  %2148 = vmatmul.mubr.f32.gmra.mxu0 %v2027
  %v2149 = vpop.f32.mrf.mxu0
  %v2150 = vadd.f32 0.0, %v2149
  %v2151 = vpop.f32.mrf.mxu0
  %2152 = vmatprep.mubr.f32.mxu0 0.0
  %2153 = vmatmul.mubr.f32.gmra.mxu0 %v2028
  %v2154 = vpop.f32.mrf.mxu0
  %v2155 = vadd.f32 0.0, %v2154
  %v2156 = vpop.f32.mrf.mxu0
  %2157 = vmatprep.mubr.f32.mxu0 0.0
  %2158 = vmatmul.mubr.f32.gmra.mxu0 %v2029
  %v2159 = vpop.f32.mrf.mxu0
  %v2160 = vadd.f32 0.0, %v2159
  %v2161 = vpop.f32.mrf.mxu0
  %2162 = vmatprep.mubr.f32.mxu0 0.0
  %2163 = vmatmul.mubr.f32.gmra.mxu0 %v2030
  %v2164 = vpop.f32.mrf.mxu0
  %v2165 = vadd.f32 0.0, %v2164
  %v2166 = vpop.f32.mrf.mxu0
  %2167 = vmatprep.mubr.f32.mxu0 0.0
  %2168 = vmatmul.mubr.f32.gmra.mxu0 %v2031
  %v2169 = vpop.f32.mrf.mxu0
  %v2170 = vadd.f32 0.0, %v2169
  %v2171 = vpop.f32.mrf.mxu0
  %2172 = vmatprep.mubr.f32.mxu0 0.0
  %2173 = vmatmul.mubr.f32.gmra.mxu0 %v2032
  %v2174 = vpop.f32.mrf.mxu0
  %v2175 = vadd.f32 0.0, %v2174
  %v2176 = vpop.f32.mrf.mxu0
  %2177 = vdwg.mxu0
  %s2178 = scalar_lea.vmem %s4, 160
  %v2179 = vld [vmem:[%s2178] sm:$0xff]
  %v2180 = vld [vmem:[%s2178 + $0x8] sm:$0xff]
  %v2181 = vld [vmem:[%s2178 + $0x10] sm:$0xff]
  %v2182 = vld [vmem:[%s2178 + $0x18] sm:$0xff]
  %v2184 = vsel %vm458, %v2100, 0
  %v2187 = vsel %vm458, %v2105, 0
  %v2190 = vsel %vm458, %v2110, 0
  %v2193 = vsel %vm458, %v2115, 0
  %v2196 = vsel %vm458, %v2120, 0
  %v2199 = vsel %vm458, %v2125, 0
  %v2202 = vsel %vm458, %v2130, 0
  %v2205 = vsel %vm458, %v2135, 0
  %v2208 = vsel %vm458, %v2140, 0
  %v2211 = vsel %vm458, %v2145, 0
  %v2214 = vsel %vm458, %v2150, 0
  %v2217 = vsel %vm458, %v2155, 0
  %v2220 = vsel %vm458, %v2160, 0
  %v2223 = vsel %vm458, %v2165, 0
  %v2226 = vsel %vm458, %v2170, 0
  %v2229 = vsel %vm458, %v2175, 0
  %2231 = vmatprep.subr.mxu0 0.0
  %2232 = vmatpush1.msra.mxu0 0.0
  %2233 = vmatprep.subr.mxu0 0.0
  %2234 = vmatpush1.msra.mxu0 0.0
  %2235 = vmatprep.subr.mxu0 0.0
  %2236 = vmatpush1.msra.mxu0 0.0
  %2237 = vmatprep.subr.mxu0 0.0
  %2238 = vmatpush1.msra.mxu0 0.0
  %2239 = vmatprep.subr.mxu0 0.0
  %2240 = vmatpush1.msra.mxu0 0.0
  %2241 = vmatprep.subr.mxu0 0.0
  %2242 = vmatpush1.msra.mxu0 0.0
  %2243 = vmatprep.subr.mxu0 0.0
  %2244 = vmatpush1.msra.mxu0 0.0
  %2245 = vmatprep.subr.mxu0 0.0
  %2246 = vmatpush1.msra.mxu0 0.0
  %2247 = vmatprep.subr.mxu0 0.0
  %2248 = vmatpush1.msra.mxu0 0.0
  %2249 = vmatprep.subr.mxu0 0.0
  %2250 = vmatpush1.msra.mxu0 0.0
  %2251 = vmatprep.subr.mxu0 0.0
  %2252 = vmatpush1.msra.mxu0 0.0
  %2253 = vmatprep.subr.mxu0 0.0
  %2254 = vmatpush1.msra.mxu0 0.0
  %2255 = vmatprep.subr.mxu0 0.0
  %2256 = vmatpush1.msra.mxu0 %v2182
  %2257 = vmatprep.subr.mxu0 0.0
  %2258 = vmatpush1.msra.mxu0 %v2181
  %2259 = vmatprep.subr.mxu0 0.0
  %2260 = vmatpush1.msra.mxu0 %v2180
  %2261 = vmatprep.subr.mxu0 0.0
  %2262 = vmatpush1.msra.mxu0 %v2179
  %2263 = vmatprep.subr.mxu0 0.0
  %2264 = vmatpush2.msra.mxu0 0.0
  %2265 = vmatprep.subr.mxu0 0.0
  %2266 = vmatpush2.msra.mxu0 0.0
  %2267 = vmatprep.subr.mxu0 0.0
  %2268 = vmatpush2.msra.mxu0 0.0
  %2269 = vmatprep.subr.mxu0 0.0
  %2270 = vmatpush2.msra.mxu0 0.0
  %2271 = vmatprep.subr.mxu0 0.0
  %2272 = vmatpush2.msra.mxu0 0.0
  %2273 = vmatprep.subr.mxu0 0.0
  %2274 = vmatpush2.msra.mxu0 0.0
  %2275 = vmatprep.subr.mxu0 0.0
  %2276 = vmatpush2.msra.mxu0 0.0
  %2277 = vmatprep.subr.mxu0 0.0
  %2278 = vmatpush2.msra.mxu0 0.0
  %2279 = vmatprep.subr.mxu0 0.0
  %2280 = vmatpush2.msra.mxu0 0.0
  %2281 = vmatprep.subr.mxu0 0.0
  %2282 = vmatpush2.msra.mxu0 0.0
  %2283 = vmatprep.subr.mxu0 0.0
  %2284 = vmatpush2.msra.mxu0 0.0
  %2285 = vmatprep.subr.mxu0 0.0
  %2286 = vmatpush2.msra.mxu0 0.0
  %2287 = vmatprep.subr.mxu0 0.0
  %2288 = vmatpush2.msra.mxu0 0.0
  %2289 = vmatprep.subr.mxu0 0.0
  %2290 = vmatpush2.msra.mxu0 0.0
  %2291 = vmatprep.subr.mxu0 0.0
  %2292 = vmatpush2.msra.mxu0 0.0
  %2293 = vmatprep.subr.mxu0 0.0
  %2294 = vmatpush2.msra.mxu0 0.0
  %2295 = vmatprep.mubr.f32.mxu0 0.0
  %2296 = vmatmul.mubr.f32.gmra.mxu0 %v2184
  %v2297 = vpop.f32.mrf.mxu0
  %v2298 = vadd.f32 0.0, %v2297
  %v2299 = vpop.f32.mrf.mxu0
  %2300 = vmatprep.mubr.f32.mxu0 0.0
  %2301 = vmatmul.mubr.f32.gmra.mxu0 %v2187
  %v2302 = vpop.f32.mrf.mxu0
  %v2303 = vadd.f32 0.0, %v2302
  %v2304 = vpop.f32.mrf.mxu0
  %2305 = vmatprep.mubr.f32.mxu0 0.0
  %2306 = vmatmul.mubr.f32.gmra.mxu0 %v2190
  %v2307 = vpop.f32.mrf.mxu0
  %v2308 = vadd.f32 0.0, %v2307
  %v2309 = vpop.f32.mrf.mxu0
  %2310 = vmatprep.mubr.f32.mxu0 0.0
  %2311 = vmatmul.mubr.f32.gmra.mxu0 %v2193
  %v2312 = vpop.f32.mrf.mxu0
  %v2313 = vadd.f32 0.0, %v2312
  %v2314 = vpop.f32.mrf.mxu0
  %2315 = vmatprep.mubr.f32.mxu0 0.0
  %2316 = vmatmul.mubr.f32.gmra.mxu0 %v2196
  %v2317 = vpop.f32.mrf.mxu0
  %v2318 = vadd.f32 0.0, %v2317
  %v2319 = vpop.f32.mrf.mxu0
  %2320 = vmatprep.mubr.f32.mxu0 0.0
  %2321 = vmatmul.mubr.f32.gmra.mxu0 %v2199
  %v2322 = vpop.f32.mrf.mxu0
  %v2323 = vadd.f32 0.0, %v2322
  %v2324 = vpop.f32.mrf.mxu0
  %2325 = vmatprep.mubr.f32.mxu0 0.0
  %2326 = vmatmul.mubr.f32.gmra.mxu0 %v2202
  %v2327 = vpop.f32.mrf.mxu0
  %v2328 = vadd.f32 0.0, %v2327
  %v2329 = vpop.f32.mrf.mxu0
  %2330 = vmatprep.mubr.f32.mxu0 0.0
  %2331 = vmatmul.mubr.f32.gmra.mxu0 %v2205
  %v2332 = vpop.f32.mrf.mxu0
  %v2333 = vadd.f32 0.0, %v2332
  %v2334 = vpop.f32.mrf.mxu0
  %2335 = vmatprep.mubr.f32.mxu0 0.0
  %2336 = vmatmul.mubr.f32.gmra.mxu0 %v2208
  %v2337 = vpop.f32.mrf.mxu0
  %v2338 = vadd.f32 0.0, %v2337
  %v2339 = vpop.f32.mrf.mxu0
  %2340 = vmatprep.mubr.f32.mxu0 0.0
  %2341 = vmatmul.mubr.f32.gmra.mxu0 %v2211
  %v2342 = vpop.f32.mrf.mxu0
  %v2343 = vadd.f32 0.0, %v2342
  %v2344 = vpop.f32.mrf.mxu0
  %2345 = vmatprep.mubr.f32.mxu0 0.0
  %2346 = vmatmul.mubr.f32.gmra.mxu0 %v2214
  %v2347 = vpop.f32.mrf.mxu0
  %v2348 = vadd.f32 0.0, %v2347
  %v2349 = vpop.f32.mrf.mxu0
  %2350 = vmatprep.mubr.f32.mxu0 0.0
  %2351 = vmatmul.mubr.f32.gmra.mxu0 %v2217
  %v2352 = vpop.f32.mrf.mxu0
  %v2353 = vadd.f32 0.0, %v2352
  %v2354 = vpop.f32.mrf.mxu0
  %2355 = vmatprep.mubr.f32.mxu0 0.0
  %2356 = vmatmul.mubr.f32.gmra.mxu0 %v2220
  %v2357 = vpop.f32.mrf.mxu0
  %v2358 = vadd.f32 0.0, %v2357
  %v2359 = vpop.f32.mrf.mxu0
  %2360 = vmatprep.mubr.f32.mxu0 0.0
  %2361 = vmatmul.mubr.f32.gmra.mxu0 %v2223
  %v2362 = vpop.f32.mrf.mxu0
  %v2363 = vadd.f32 0.0, %v2362
  %v2364 = vpop.f32.mrf.mxu0
  %2365 = vmatprep.mubr.f32.mxu0 0.0
  %2366 = vmatmul.mubr.f32.gmra.mxu0 %v2226
  %v2367 = vpop.f32.mrf.mxu0
  %v2368 = vadd.f32 0.0, %v2367
  %v2369 = vpop.f32.mrf.mxu0
  %2370 = vmatprep.mubr.f32.mxu0 0.0
  %2371 = vmatmul.mubr.f32.gmra.mxu0 %v2229
  %v2372 = vpop.f32.mrf.mxu0
  %v2373 = vadd.f32 0.0, %v2372
  %v2374 = vpop.f32.mrf.mxu0
  %2375 = vdwg.mxu0
  %v2376 = vadd.f32 %v2000, %v2298
  %v2377 = vadd.f32 %v2001, %v2303
  %v2378 = vadd.f32 %v2002, %v2308
  %v2379 = vadd.f32 %v2003, %v2313
  %v2380 = vadd.f32 %v2004, %v2318
  %v2381 = vadd.f32 %v2005, %v2323
  %v2382 = vadd.f32 %v2006, %v2328
  %v2383 = vadd.f32 %v2007, %v2333
  %v2384 = vadd.f32 %v2008, %v2338
  %v2385 = vadd.f32 %v2009, %v2343
  %v2386 = vadd.f32 %v2010, %v2348
  %v2387 = vadd.f32 %v2011, %v2353
  %v2388 = vadd.f32 %v2012, %v2358
  %v2389 = vadd.f32 %v2013, %v2363
  %v2390 = vadd.f32 %v2014, %v2368
  %v2391 = vadd.f32 %v2015, %v2373
  %s2392 = scalar_lea.vmem %s1, 1280
  %v2393 = vld [vmem:[%s2392] sm:$0xff]
  %v2394 = vld [vmem:[%s2392 + $0x8] sm:$0xff]
  %v2395 = vld [vmem:[%s2392 + $0x10] sm:$0xff]
  %v2396 = vld [vmem:[%s2392 + $0x18] sm:$0xff]
  %v2397 = vld [vmem:[%s2392 + $0x20] sm:$0xff]
  %v2398 = vld [vmem:[%s2392 + $0x28] sm:$0xff]
  %v2399 = vld [vmem:[%s2392 + $0x30] sm:$0xff]
  %v2400 = vld [vmem:[%s2392 + $0x38] sm:$0xff]
  %v2401 = vld [vmem:[%s2392 + $0x40] sm:$0xff]
  %v2402 = vld [vmem:[%s2392 + $0x48] sm:$0xff]
  %v2403 = vld [vmem:[%s2392 + $0x50] sm:$0xff]
  %v2404 = vld [vmem:[%s2392 + $0x58] sm:$0xff]
  %v2405 = vld [vmem:[%s2392 + $0x60] sm:$0xff]
  %v2406 = vld [vmem:[%s2392 + $0x68] sm:$0xff]
  %v2407 = vld [vmem:[%s2392 + $0x70] sm:$0xff]
  %v2408 = vld [vmem:[%s2392 + $0x78] sm:$0xff]
  %2409 = vmatprep.subr.mxu0 0.0
  %2410 = vmatpush1.msra.mxu0 %v290
  %2411 = vmatprep.subr.mxu0 0.0
  %2412 = vmatpush1.msra.mxu0 %v289
  %2413 = vmatprep.subr.mxu0 0.0
  %2414 = vmatpush1.msra.mxu0 %v288
  %2415 = vmatprep.subr.mxu0 0.0
  %2416 = vmatpush1.msra.mxu0 %v287
  %2417 = vmatprep.subr.mxu0 0.0
  %2418 = vmatpush1.msra.mxu0 %v286
  %2419 = vmatprep.subr.mxu0 0.0
  %2420 = vmatpush1.msra.mxu0 %v285
  %2421 = vmatprep.subr.mxu0 0.0
  %2422 = vmatpush1.msra.mxu0 %v284
  %2423 = vmatprep.subr.mxu0 0.0
  %2424 = vmatpush1.msra.mxu0 %v283
  %2425 = vmatprep.subr.mxu0 0.0
  %2426 = vmatpush1.msra.mxu0 %v282
  %2427 = vmatprep.subr.mxu0 0.0
  %2428 = vmatpush1.msra.mxu0 %v281
  %2429 = vmatprep.subr.mxu0 0.0
  %2430 = vmatpush1.msra.mxu0 %v280
  %2431 = vmatprep.subr.mxu0 0.0
  %2432 = vmatpush1.msra.mxu0 %v279
  %2433 = vmatprep.subr.mxu0 0.0
  %2434 = vmatpush1.msra.mxu0 %v278
  %2435 = vmatprep.subr.mxu0 0.0
  %2436 = vmatpush1.msra.mxu0 %v277
  %2437 = vmatprep.subr.mxu0 0.0
  %2438 = vmatpush1.msra.mxu0 %v276
  %2439 = vmatprep.subr.mxu0 0.0
  %2440 = vmatpush1.msra.mxu0 %v275
  %2441 = vmatprep.subr.mxu0 0.0
  %2442 = vmatpush2.msra.mxu0 0.0
  %2443 = vmatprep.subr.mxu0 0.0
  %2444 = vmatpush2.msra.mxu0 0.0
  %2445 = vmatprep.subr.mxu0 0.0
  %2446 = vmatpush2.msra.mxu0 0.0
  %2447 = vmatprep.subr.mxu0 0.0
  %2448 = vmatpush2.msra.mxu0 0.0
  %2449 = vmatprep.subr.mxu0 0.0
  %2450 = vmatpush2.msra.mxu0 0.0
  %2451 = vmatprep.subr.mxu0 0.0
  %2452 = vmatpush2.msra.mxu0 0.0
  %2453 = vmatprep.subr.mxu0 0.0
  %2454 = vmatpush2.msra.mxu0 0.0
  %2455 = vmatprep.subr.mxu0 0.0
  %2456 = vmatpush2.msra.mxu0 0.0
  %2457 = vmatprep.subr.mxu0 0.0
  %2458 = vmatpush2.msra.mxu0 0.0
  %2459 = vmatprep.subr.mxu0 0.0
  %2460 = vmatpush2.msra.mxu0 0.0
  %2461 = vmatprep.subr.mxu0 0.0
  %2462 = vmatpush2.msra.mxu0 0.0
  %2463 = vmatprep.subr.mxu0 0.0
  %2464 = vmatpush2.msra.mxu0 0.0
  %2465 = vmatprep.subr.mxu0 0.0
  %2466 = vmatpush2.msra.mxu0 0.0
  %2467 = vmatprep.subr.mxu0 0.0
  %2468 = vmatpush2.msra.mxu0 0.0
  %2469 = vmatprep.subr.mxu0 0.0
  %2470 = vmatpush2.msra.mxu0 0.0
  %2471 = vmatprep.subr.mxu0 0.0
  %2472 = vmatpush2.msra.mxu0 0.0
  %2473 = vmatprep.mubr.f32.mxu0 0.0
  %2474 = vmatmul.mubr.f32.gmra.mxu0 %v2393
  %v2475 = vpop.f32.mrf.mxu0
  %v2476 = vadd.f32 0.0, %v2475
  %v2477 = vpop.f32.mrf.mxu0
  %2478 = vmatprep.mubr.f32.mxu0 0.0
  %2479 = vmatmul.mubr.f32.gmra.mxu0 %v2394
  %v2480 = vpop.f32.mrf.mxu0
  %v2481 = vadd.f32 0.0, %v2480
  %v2482 = vpop.f32.mrf.mxu0
  %2483 = vmatprep.mubr.f32.mxu0 0.0
  %2484 = vmatmul.mubr.f32.gmra.mxu0 %v2395
  %v2485 = vpop.f32.mrf.mxu0
  %v2486 = vadd.f32 0.0, %v2485
  %v2487 = vpop.f32.mrf.mxu0
  %2488 = vmatprep.mubr.f32.mxu0 0.0
  %2489 = vmatmul.mubr.f32.gmra.mxu0 %v2396
  %v2490 = vpop.f32.mrf.mxu0
  %v2491 = vadd.f32 0.0, %v2490
  %v2492 = vpop.f32.mrf.mxu0
  %2493 = vmatprep.mubr.f32.mxu0 0.0
  %2494 = vmatmul.mubr.f32.gmra.mxu0 %v2397
  %v2495 = vpop.f32.mrf.mxu0
  %v2496 = vadd.f32 0.0, %v2495
  %v2497 = vpop.f32.mrf.mxu0
  %2498 = vmatprep.mubr.f32.mxu0 0.0
  %2499 = vmatmul.mubr.f32.gmra.mxu0 %v2398
  %v2500 = vpop.f32.mrf.mxu0
  %v2501 = vadd.f32 0.0, %v2500
  %v2502 = vpop.f32.mrf.mxu0
  %2503 = vmatprep.mubr.f32.mxu0 0.0
  %2504 = vmatmul.mubr.f32.gmra.mxu0 %v2399
  %v2505 = vpop.f32.mrf.mxu0
  %v2506 = vadd.f32 0.0, %v2505
  %v2507 = vpop.f32.mrf.mxu0
  %2508 = vmatprep.mubr.f32.mxu0 0.0
  %2509 = vmatmul.mubr.f32.gmra.mxu0 %v2400
  %v2510 = vpop.f32.mrf.mxu0
  %v2511 = vadd.f32 0.0, %v2510
  %v2512 = vpop.f32.mrf.mxu0
  %2513 = vmatprep.mubr.f32.mxu0 0.0
  %2514 = vmatmul.mubr.f32.gmra.mxu0 %v2401
  %v2515 = vpop.f32.mrf.mxu0
  %v2516 = vadd.f32 0.0, %v2515
  %v2517 = vpop.f32.mrf.mxu0
  %2518 = vmatprep.mubr.f32.mxu0 0.0
  %2519 = vmatmul.mubr.f32.gmra.mxu0 %v2402
  %v2520 = vpop.f32.mrf.mxu0
  %v2521 = vadd.f32 0.0, %v2520
  %v2522 = vpop.f32.mrf.mxu0
  %2523 = vmatprep.mubr.f32.mxu0 0.0
  %2524 = vmatmul.mubr.f32.gmra.mxu0 %v2403
  %v2525 = vpop.f32.mrf.mxu0
  %v2526 = vadd.f32 0.0, %v2525
  %v2527 = vpop.f32.mrf.mxu0
  %2528 = vmatprep.mubr.f32.mxu0 0.0
  %2529 = vmatmul.mubr.f32.gmra.mxu0 %v2404
  %v2530 = vpop.f32.mrf.mxu0
  %v2531 = vadd.f32 0.0, %v2530
  %v2532 = vpop.f32.mrf.mxu0
  %2533 = vmatprep.mubr.f32.mxu0 0.0
  %2534 = vmatmul.mubr.f32.gmra.mxu0 %v2405
  %v2535 = vpop.f32.mrf.mxu0
  %v2536 = vadd.f32 0.0, %v2535
  %v2537 = vpop.f32.mrf.mxu0
  %2538 = vmatprep.mubr.f32.mxu0 0.0
  %2539 = vmatmul.mubr.f32.gmra.mxu0 %v2406
  %v2540 = vpop.f32.mrf.mxu0
  %v2541 = vadd.f32 0.0, %v2540
  %v2542 = vpop.f32.mrf.mxu0
  %2543 = vmatprep.mubr.f32.mxu0 0.0
  %2544 = vmatmul.mubr.f32.gmra.mxu0 %v2407
  %v2545 = vpop.f32.mrf.mxu0
  %v2546 = vadd.f32 0.0, %v2545
  %v2547 = vpop.f32.mrf.mxu0
  %2548 = vmatprep.mubr.f32.mxu0 0.0
  %2549 = vmatmul.mubr.f32.gmra.mxu0 %v2408
  %v2550 = vpop.f32.mrf.mxu0
  %v2551 = vadd.f32 0.0, %v2550
  %v2552 = vpop.f32.mrf.mxu0
  %2553 = vdwg.mxu0
  %s2554 = scalar_lea.vmem %s4, 192
  %v2555 = vld [vmem:[%s2554] sm:$0xff]
  %v2556 = vld [vmem:[%s2554 + $0x8] sm:$0xff]
  %v2557 = vld [vmem:[%s2554 + $0x10] sm:$0xff]
  %v2558 = vld [vmem:[%s2554 + $0x18] sm:$0xff]
  %v2560 = vsel %vm458, %v2476, 0
  %v2563 = vsel %vm458, %v2481, 0
  %v2566 = vsel %vm458, %v2486, 0
  %v2569 = vsel %vm458, %v2491, 0
  %v2572 = vsel %vm458, %v2496, 0
  %v2575 = vsel %vm458, %v2501, 0
  %v2578 = vsel %vm458, %v2506, 0
  %v2581 = vsel %vm458, %v2511, 0
  %v2584 = vsel %vm458, %v2516, 0
  %v2587 = vsel %vm458, %v2521, 0
  %v2590 = vsel %vm458, %v2526, 0
  %v2593 = vsel %vm458, %v2531, 0
  %v2596 = vsel %vm458, %v2536, 0
  %v2599 = vsel %vm458, %v2541, 0
  %v2602 = vsel %vm458, %v2546, 0
  %v2605 = vsel %vm458, %v2551, 0
  %2607 = vmatprep.subr.mxu0 0.0
  %2608 = vmatpush1.msra.mxu0 0.0
  %2609 = vmatprep.subr.mxu0 0.0
  %2610 = vmatpush1.msra.mxu0 0.0
  %2611 = vmatprep.subr.mxu0 0.0
  %2612 = vmatpush1.msra.mxu0 0.0
  %2613 = vmatprep.subr.mxu0 0.0
  %2614 = vmatpush1.msra.mxu0 0.0
  %2615 = vmatprep.subr.mxu0 0.0
  %2616 = vmatpush1.msra.mxu0 0.0
  %2617 = vmatprep.subr.mxu0 0.0
  %2618 = vmatpush1.msra.mxu0 0.0
  %2619 = vmatprep.subr.mxu0 0.0
  %2620 = vmatpush1.msra.mxu0 0.0
  %2621 = vmatprep.subr.mxu0 0.0
  %2622 = vmatpush1.msra.mxu0 0.0
  %2623 = vmatprep.subr.mxu0 0.0
  %2624 = vmatpush1.msra.mxu0 0.0
  %2625 = vmatprep.subr.mxu0 0.0
  %2626 = vmatpush1.msra.mxu0 0.0
  %2627 = vmatprep.subr.mxu0 0.0
  %2628 = vmatpush1.msra.mxu0 0.0
  %2629 = vmatprep.subr.mxu0 0.0
  %2630 = vmatpush1.msra.mxu0 0.0
  %2631 = vmatprep.subr.mxu0 0.0
  %2632 = vmatpush1.msra.mxu0 %v2558
  %2633 = vmatprep.subr.mxu0 0.0
  %2634 = vmatpush1.msra.mxu0 %v2557
  %2635 = vmatprep.subr.mxu0 0.0
  %2636 = vmatpush1.msra.mxu0 %v2556
  %2637 = vmatprep.subr.mxu0 0.0
  %2638 = vmatpush1.msra.mxu0 %v2555
  %2639 = vmatprep.subr.mxu0 0.0
  %2640 = vmatpush2.msra.mxu0 0.0
  %2641 = vmatprep.subr.mxu0 0.0
  %2642 = vmatpush2.msra.mxu0 0.0
  %2643 = vmatprep.subr.mxu0 0.0
  %2644 = vmatpush2.msra.mxu0 0.0
  %2645 = vmatprep.subr.mxu0 0.0
  %2646 = vmatpush2.msra.mxu0 0.0
  %2647 = vmatprep.subr.mxu0 0.0
  %2648 = vmatpush2.msra.mxu0 0.0
  %2649 = vmatprep.subr.mxu0 0.0
  %2650 = vmatpush2.msra.mxu0 0.0
  %2651 = vmatprep.subr.mxu0 0.0
  %2652 = vmatpush2.msra.mxu0 0.0
  %2653 = vmatprep.subr.mxu0 0.0
  %2654 = vmatpush2.msra.mxu0 0.0
  %2655 = vmatprep.subr.mxu0 0.0
  %2656 = vmatpush2.msra.mxu0 0.0
  %2657 = vmatprep.subr.mxu0 0.0
  %2658 = vmatpush2.msra.mxu0 0.0
  %2659 = vmatprep.subr.mxu0 0.0
  %2660 = vmatpush2.msra.mxu0 0.0
  %2661 = vmatprep.subr.mxu0 0.0
  %2662 = vmatpush2.msra.mxu0 0.0
  %2663 = vmatprep.subr.mxu0 0.0
  %2664 = vmatpush2.msra.mxu0 0.0
  %2665 = vmatprep.subr.mxu0 0.0
  %2666 = vmatpush2.msra.mxu0 0.0
  %2667 = vmatprep.subr.mxu0 0.0
  %2668 = vmatpush2.msra.mxu0 0.0
  %2669 = vmatprep.subr.mxu0 0.0
  %2670 = vmatpush2.msra.mxu0 0.0
  %2671 = vmatprep.mubr.f32.mxu0 0.0
  %2672 = vmatmul.mubr.f32.gmra.mxu0 %v2560
  %v2673 = vpop.f32.mrf.mxu0
  %v2674 = vadd.f32 0.0, %v2673
  %v2675 = vpop.f32.mrf.mxu0
  %2676 = vmatprep.mubr.f32.mxu0 0.0
  %2677 = vmatmul.mubr.f32.gmra.mxu0 %v2563
  %v2678 = vpop.f32.mrf.mxu0
  %v2679 = vadd.f32 0.0, %v2678
  %v2680 = vpop.f32.mrf.mxu0
  %2681 = vmatprep.mubr.f32.mxu0 0.0
  %2682 = vmatmul.mubr.f32.gmra.mxu0 %v2566
  %v2683 = vpop.f32.mrf.mxu0
  %v2684 = vadd.f32 0.0, %v2683
  %v2685 = vpop.f32.mrf.mxu0
  %2686 = vmatprep.mubr.f32.mxu0 0.0
  %2687 = vmatmul.mubr.f32.gmra.mxu0 %v2569
  %v2688 = vpop.f32.mrf.mxu0
  %v2689 = vadd.f32 0.0, %v2688
  %v2690 = vpop.f32.mrf.mxu0
  %2691 = vmatprep.mubr.f32.mxu0 0.0
  %2692 = vmatmul.mubr.f32.gmra.mxu0 %v2572
  %v2693 = vpop.f32.mrf.mxu0
  %v2694 = vadd.f32 0.0, %v2693
  %v2695 = vpop.f32.mrf.mxu0
  %2696 = vmatprep.mubr.f32.mxu0 0.0
  %2697 = vmatmul.mubr.f32.gmra.mxu0 %v2575
  %v2698 = vpop.f32.mrf.mxu0
  %v2699 = vadd.f32 0.0, %v2698
  %v2700 = vpop.f32.mrf.mxu0
  %2701 = vmatprep.mubr.f32.mxu0 0.0
  %2702 = vmatmul.mubr.f32.gmra.mxu0 %v2578
  %v2703 = vpop.f32.mrf.mxu0
  %v2704 = vadd.f32 0.0, %v2703
  %v2705 = vpop.f32.mrf.mxu0
  %2706 = vmatprep.mubr.f32.mxu0 0.0
  %2707 = vmatmul.mubr.f32.gmra.mxu0 %v2581
  %v2708 = vpop.f32.mrf.mxu0
  %v2709 = vadd.f32 0.0, %v2708
  %v2710 = vpop.f32.mrf.mxu0
  %2711 = vmatprep.mubr.f32.mxu0 0.0
  %2712 = vmatmul.mubr.f32.gmra.mxu0 %v2584
  %v2713 = vpop.f32.mrf.mxu0
  %v2714 = vadd.f32 0.0, %v2713
  %v2715 = vpop.f32.mrf.mxu0
  %2716 = vmatprep.mubr.f32.mxu0 0.0
  %2717 = vmatmul.mubr.f32.gmra.mxu0 %v2587
  %v2718 = vpop.f32.mrf.mxu0
  %v2719 = vadd.f32 0.0, %v2718
  %v2720 = vpop.f32.mrf.mxu0
  %2721 = vmatprep.mubr.f32.mxu0 0.0
  %2722 = vmatmul.mubr.f32.gmra.mxu0 %v2590
  %v2723 = vpop.f32.mrf.mxu0
  %v2724 = vadd.f32 0.0, %v2723
  %v2725 = vpop.f32.mrf.mxu0
  %2726 = vmatprep.mubr.f32.mxu0 0.0
  %2727 = vmatmul.mubr.f32.gmra.mxu0 %v2593
  %v2728 = vpop.f32.mrf.mxu0
  %v2729 = vadd.f32 0.0, %v2728
  %v2730 = vpop.f32.mrf.mxu0
  %2731 = vmatprep.mubr.f32.mxu0 0.0
  %2732 = vmatmul.mubr.f32.gmra.mxu0 %v2596
  %v2733 = vpop.f32.mrf.mxu0
  %v2734 = vadd.f32 0.0, %v2733
  %v2735 = vpop.f32.mrf.mxu0
  %2736 = vmatprep.mubr.f32.mxu0 0.0
  %2737 = vmatmul.mubr.f32.gmra.mxu0 %v2599
  %v2738 = vpop.f32.mrf.mxu0
  %v2739 = vadd.f32 0.0, %v2738
  %v2740 = vpop.f32.mrf.mxu0
  %2741 = vmatprep.mubr.f32.mxu0 0.0
  %2742 = vmatmul.mubr.f32.gmra.mxu0 %v2602
  %v2743 = vpop.f32.mrf.mxu0
  %v2744 = vadd.f32 0.0, %v2743
  %v2745 = vpop.f32.mrf.mxu0
  %2746 = vmatprep.mubr.f32.mxu0 0.0
  %2747 = vmatmul.mubr.f32.gmra.mxu0 %v2605
  %v2748 = vpop.f32.mrf.mxu0
  %v2749 = vadd.f32 0.0, %v2748
  %v2750 = vpop.f32.mrf.mxu0
  %2751 = vdwg.mxu0
  %v2752 = vadd.f32 %v2376, %v2674
  %v2753 = vadd.f32 %v2377, %v2679
  %v2754 = vadd.f32 %v2378, %v2684
  %v2755 = vadd.f32 %v2379, %v2689
  %v2756 = vadd.f32 %v2380, %v2694
  %v2757 = vadd.f32 %v2381, %v2699
  %v2758 = vadd.f32 %v2382, %v2704
  %v2759 = vadd.f32 %v2383, %v2709
  %v2760 = vadd.f32 %v2384, %v2714
  %v2761 = vadd.f32 %v2385, %v2719
  %v2762 = vadd.f32 %v2386, %v2724
  %v2763 = vadd.f32 %v2387, %v2729
  %v2764 = vadd.f32 %v2388, %v2734
  %v2765 = vadd.f32 %v2389, %v2739
  %v2766 = vadd.f32 %v2390, %v2744
  %v2767 = vadd.f32 %v2391, %v2749
  %s2768 = scalar_lea.vmem %s1, 1408
  %v2769 = vld [vmem:[%s2768] sm:$0xff]
  %v2770 = vld [vmem:[%s2768 + $0x8] sm:$0xff]
  %v2771 = vld [vmem:[%s2768 + $0x10] sm:$0xff]
  %v2772 = vld [vmem:[%s2768 + $0x18] sm:$0xff]
  %v2773 = vld [vmem:[%s2768 + $0x20] sm:$0xff]
  %v2774 = vld [vmem:[%s2768 + $0x28] sm:$0xff]
  %v2775 = vld [vmem:[%s2768 + $0x30] sm:$0xff]
  %v2776 = vld [vmem:[%s2768 + $0x38] sm:$0xff]
  %v2777 = vld [vmem:[%s2768 + $0x40] sm:$0xff]
  %v2778 = vld [vmem:[%s2768 + $0x48] sm:$0xff]
  %v2779 = vld [vmem:[%s2768 + $0x50] sm:$0xff]
  %v2780 = vld [vmem:[%s2768 + $0x58] sm:$0xff]
  %v2781 = vld [vmem:[%s2768 + $0x60] sm:$0xff]
  %v2782 = vld [vmem:[%s2768 + $0x68] sm:$0xff]
  %v2783 = vld [vmem:[%s2768 + $0x70] sm:$0xff]
  %v2784 = vld [vmem:[%s2768 + $0x78] sm:$0xff]
  %2785 = vmatprep.subr.mxu0 0.0
  %2786 = vmatpush1.msra.mxu0 %v290
  %2787 = vmatprep.subr.mxu0 0.0
  %2788 = vmatpush1.msra.mxu0 %v289
  %2789 = vmatprep.subr.mxu0 0.0
  %2790 = vmatpush1.msra.mxu0 %v288
  %2791 = vmatprep.subr.mxu0 0.0
  %2792 = vmatpush1.msra.mxu0 %v287
  %2793 = vmatprep.subr.mxu0 0.0
  %2794 = vmatpush1.msra.mxu0 %v286
  %2795 = vmatprep.subr.mxu0 0.0
  %2796 = vmatpush1.msra.mxu0 %v285
  %2797 = vmatprep.subr.mxu0 0.0
  %2798 = vmatpush1.msra.mxu0 %v284
  %2799 = vmatprep.subr.mxu0 0.0
  %2800 = vmatpush1.msra.mxu0 %v283
  %2801 = vmatprep.subr.mxu0 0.0
  %2802 = vmatpush1.msra.mxu0 %v282
  %2803 = vmatprep.subr.mxu0 0.0
  %2804 = vmatpush1.msra.mxu0 %v281
  %2805 = vmatprep.subr.mxu0 0.0
  %2806 = vmatpush1.msra.mxu0 %v280
  %2807 = vmatprep.subr.mxu0 0.0
  %2808 = vmatpush1.msra.mxu0 %v279
  %2809 = vmatprep.subr.mxu0 0.0
  %2810 = vmatpush1.msra.mxu0 %v278
  %2811 = vmatprep.subr.mxu0 0.0
  %2812 = vmatpush1.msra.mxu0 %v277
  %2813 = vmatprep.subr.mxu0 0.0
  %2814 = vmatpush1.msra.mxu0 %v276
  %2815 = vmatprep.subr.mxu0 0.0
  %2816 = vmatpush1.msra.mxu0 %v275
  %2817 = vmatprep.subr.mxu0 0.0
  %2818 = vmatpush2.msra.mxu0 0.0
  %2819 = vmatprep.subr.mxu0 0.0
  %2820 = vmatpush2.msra.mxu0 0.0
  %2821 = vmatprep.subr.mxu0 0.0
  %2822 = vmatpush2.msra.mxu0 0.0
  %2823 = vmatprep.subr.mxu0 0.0
  %2824 = vmatpush2.msra.mxu0 0.0
  %2825 = vmatprep.subr.mxu0 0.0
  %2826 = vmatpush2.msra.mxu0 0.0
  %2827 = vmatprep.subr.mxu0 0.0
  %2828 = vmatpush2.msra.mxu0 0.0
  %2829 = vmatprep.subr.mxu0 0.0
  %2830 = vmatpush2.msra.mxu0 0.0
  %2831 = vmatprep.subr.mxu0 0.0
  %2832 = vmatpush2.msra.mxu0 0.0
  %2833 = vmatprep.subr.mxu0 0.0
  %2834 = vmatpush2.msra.mxu0 0.0
  %2835 = vmatprep.subr.mxu0 0.0
  %2836 = vmatpush2.msra.mxu0 0.0
  %2837 = vmatprep.subr.mxu0 0.0
  %2838 = vmatpush2.msra.mxu0 0.0
  %2839 = vmatprep.subr.mxu0 0.0
  %2840 = vmatpush2.msra.mxu0 0.0
  %2841 = vmatprep.subr.mxu0 0.0
  %2842 = vmatpush2.msra.mxu0 0.0
  %2843 = vmatprep.subr.mxu0 0.0
  %2844 = vmatpush2.msra.mxu0 0.0
  %2845 = vmatprep.subr.mxu0 0.0
  %2846 = vmatpush2.msra.mxu0 0.0
  %2847 = vmatprep.subr.mxu0 0.0
  %2848 = vmatpush2.msra.mxu0 0.0
  %2849 = vmatprep.mubr.f32.mxu0 0.0
  %2850 = vmatmul.mubr.f32.gmra.mxu0 %v2769
  %v2851 = vpop.f32.mrf.mxu0
  %v2852 = vadd.f32 0.0, %v2851
  %v2853 = vpop.f32.mrf.mxu0
  %2854 = vmatprep.mubr.f32.mxu0 0.0
  %2855 = vmatmul.mubr.f32.gmra.mxu0 %v2770
  %v2856 = vpop.f32.mrf.mxu0
  %v2857 = vadd.f32 0.0, %v2856
  %v2858 = vpop.f32.mrf.mxu0
  %2859 = vmatprep.mubr.f32.mxu0 0.0
  %2860 = vmatmul.mubr.f32.gmra.mxu0 %v2771
  %v2861 = vpop.f32.mrf.mxu0
  %v2862 = vadd.f32 0.0, %v2861
  %v2863 = vpop.f32.mrf.mxu0
  %2864 = vmatprep.mubr.f32.mxu0 0.0
  %2865 = vmatmul.mubr.f32.gmra.mxu0 %v2772
  %v2866 = vpop.f32.mrf.mxu0
  %v2867 = vadd.f32 0.0, %v2866
  %v2868 = vpop.f32.mrf.mxu0
  %2869 = vmatprep.mubr.f32.mxu0 0.0
  %2870 = vmatmul.mubr.f32.gmra.mxu0 %v2773
  %v2871 = vpop.f32.mrf.mxu0
  %v2872 = vadd.f32 0.0, %v2871
  %v2873 = vpop.f32.mrf.mxu0
  %2874 = vmatprep.mubr.f32.mxu0 0.0
  %2875 = vmatmul.mubr.f32.gmra.mxu0 %v2774
  %v2876 = vpop.f32.mrf.mxu0
  %v2877 = vadd.f32 0.0, %v2876
  %v2878 = vpop.f32.mrf.mxu0
  %2879 = vmatprep.mubr.f32.mxu0 0.0
  %2880 = vmatmul.mubr.f32.gmra.mxu0 %v2775
  %v2881 = vpop.f32.mrf.mxu0
  %v2882 = vadd.f32 0.0, %v2881
  %v2883 = vpop.f32.mrf.mxu0
  %2884 = vmatprep.mubr.f32.mxu0 0.0
  %2885 = vmatmul.mubr.f32.gmra.mxu0 %v2776
  %v2886 = vpop.f32.mrf.mxu0
  %v2887 = vadd.f32 0.0, %v2886
  %v2888 = vpop.f32.mrf.mxu0
  %2889 = vmatprep.mubr.f32.mxu0 0.0
  %2890 = vmatmul.mubr.f32.gmra.mxu0 %v2777
  %v2891 = vpop.f32.mrf.mxu0
  %v2892 = vadd.f32 0.0, %v2891
  %v2893 = vpop.f32.mrf.mxu0
  %2894 = vmatprep.mubr.f32.mxu0 0.0
  %2895 = vmatmul.mubr.f32.gmra.mxu0 %v2778
  %v2896 = vpop.f32.mrf.mxu0
  %v2897 = vadd.f32 0.0, %v2896
  %v2898 = vpop.f32.mrf.mxu0
  %2899 = vmatprep.mubr.f32.mxu0 0.0
  %2900 = vmatmul.mubr.f32.gmra.mxu0 %v2779
  %v2901 = vpop.f32.mrf.mxu0
  %v2902 = vadd.f32 0.0, %v2901
  %v2903 = vpop.f32.mrf.mxu0
  %2904 = vmatprep.mubr.f32.mxu0 0.0
  %2905 = vmatmul.mubr.f32.gmra.mxu0 %v2780
  %v2906 = vpop.f32.mrf.mxu0
  %v2907 = vadd.f32 0.0, %v2906
  %v2908 = vpop.f32.mrf.mxu0
  %2909 = vmatprep.mubr.f32.mxu0 0.0
  %2910 = vmatmul.mubr.f32.gmra.mxu0 %v2781
  %v2911 = vpop.f32.mrf.mxu0
  %v2912 = vadd.f32 0.0, %v2911
  %v2913 = vpop.f32.mrf.mxu0
  %2914 = vmatprep.mubr.f32.mxu0 0.0
  %2915 = vmatmul.mubr.f32.gmra.mxu0 %v2782
  %v2916 = vpop.f32.mrf.mxu0
  %v2917 = vadd.f32 0.0, %v2916
  %v2918 = vpop.f32.mrf.mxu0
  %2919 = vmatprep.mubr.f32.mxu0 0.0
  %2920 = vmatmul.mubr.f32.gmra.mxu0 %v2783
  %v2921 = vpop.f32.mrf.mxu0
  %v2922 = vadd.f32 0.0, %v2921
  %v2923 = vpop.f32.mrf.mxu0
  %2924 = vmatprep.mubr.f32.mxu0 0.0
  %2925 = vmatmul.mubr.f32.gmra.mxu0 %v2784
  %v2926 = vpop.f32.mrf.mxu0
  %v2927 = vadd.f32 0.0, %v2926
  %v2928 = vpop.f32.mrf.mxu0
  %2929 = vdwg.mxu0
  %s2930 = scalar_lea.vmem %s4, 224
  %v2931 = vld [vmem:[%s2930] sm:$0xff]
  %v2932 = vld [vmem:[%s2930 + $0x8] sm:$0xff]
  %v2933 = vld [vmem:[%s2930 + $0x10] sm:$0xff]
  %v2934 = vld [vmem:[%s2930 + $0x18] sm:$0xff]
  %v2936 = vsel %vm458, %v2852, 0
  %v2939 = vsel %vm458, %v2857, 0
  %v2942 = vsel %vm458, %v2862, 0
  %v2945 = vsel %vm458, %v2867, 0
  %v2948 = vsel %vm458, %v2872, 0
  %v2951 = vsel %vm458, %v2877, 0
  %v2954 = vsel %vm458, %v2882, 0
  %v2957 = vsel %vm458, %v2887, 0
  %v2960 = vsel %vm458, %v2892, 0
  %v2963 = vsel %vm458, %v2897, 0
  %v2966 = vsel %vm458, %v2902, 0
  %v2969 = vsel %vm458, %v2907, 0
  %v2972 = vsel %vm458, %v2912, 0
  %v2975 = vsel %vm458, %v2917, 0
  %v2978 = vsel %vm458, %v2922, 0
  %v2981 = vsel %vm458, %v2927, 0
  %2983 = vmatprep.subr.mxu0 0.0
  %2984 = vmatpush1.msra.mxu0 0.0
  %2985 = vmatprep.subr.mxu0 0.0
  %2986 = vmatpush1.msra.mxu0 0.0
  %2987 = vmatprep.subr.mxu0 0.0
  %2988 = vmatpush1.msra.mxu0 0.0
  %2989 = vmatprep.subr.mxu0 0.0
  %2990 = vmatpush1.msra.mxu0 0.0
  %2991 = vmatprep.subr.mxu0 0.0
  %2992 = vmatpush1.msra.mxu0 0.0
  %2993 = vmatprep.subr.mxu0 0.0
  %2994 = vmatpush1.msra.mxu0 0.0
  %2995 = vmatprep.subr.mxu0 0.0
  %2996 = vmatpush1.msra.mxu0 0.0
  %2997 = vmatprep.subr.mxu0 0.0
  %2998 = vmatpush1.msra.mxu0 0.0
  %2999 = vmatprep.subr.mxu0 0.0
  %3000 = vmatpush1.msra.mxu0 0.0
  %3001 = vmatprep.subr.mxu0 0.0
  %3002 = vmatpush1.msra.mxu0 0.0
  %3003 = vmatprep.subr.mxu0 0.0
  %3004 = vmatpush1.msra.mxu0 0.0
  %3005 = vmatprep.subr.mxu0 0.0
  %3006 = vmatpush1.msra.mxu0 0.0
  %3007 = vmatprep.subr.mxu0 0.0
  %3008 = vmatpush1.msra.mxu0 %v2934
  %3009 = vmatprep.subr.mxu0 0.0
  %3010 = vmatpush1.msra.mxu0 %v2933
  %3011 = vmatprep.subr.mxu0 0.0
  %3012 = vmatpush1.msra.mxu0 %v2932
  %3013 = vmatprep.subr.mxu0 0.0
  %3014 = vmatpush1.msra.mxu0 %v2931
  %3015 = vmatprep.subr.mxu0 0.0
  %3016 = vmatpush2.msra.mxu0 0.0
  %3017 = vmatprep.subr.mxu0 0.0
  %3018 = vmatpush2.msra.mxu0 0.0
  %3019 = vmatprep.subr.mxu0 0.0
  %3020 = vmatpush2.msra.mxu0 0.0
  %3021 = vmatprep.subr.mxu0 0.0
  %3022 = vmatpush2.msra.mxu0 0.0
  %3023 = vmatprep.subr.mxu0 0.0
  %3024 = vmatpush2.msra.mxu0 0.0
  %3025 = vmatprep.subr.mxu0 0.0
  %3026 = vmatpush2.msra.mxu0 0.0
  %3027 = vmatprep.subr.mxu0 0.0
  %3028 = vmatpush2.msra.mxu0 0.0
  %3029 = vmatprep.subr.mxu0 0.0
  %3030 = vmatpush2.msra.mxu0 0.0
  %3031 = vmatprep.subr.mxu0 0.0
  %3032 = vmatpush2.msra.mxu0 0.0
  %3033 = vmatprep.subr.mxu0 0.0
  %3034 = vmatpush2.msra.mxu0 0.0
  %3035 = vmatprep.subr.mxu0 0.0
  %3036 = vmatpush2.msra.mxu0 0.0
  %3037 = vmatprep.subr.mxu0 0.0
  %3038 = vmatpush2.msra.mxu0 0.0
  %3039 = vmatprep.subr.mxu0 0.0
  %3040 = vmatpush2.msra.mxu0 0.0
  %3041 = vmatprep.subr.mxu0 0.0
  %3042 = vmatpush2.msra.mxu0 0.0
  %3043 = vmatprep.subr.mxu0 0.0
  %3044 = vmatpush2.msra.mxu0 0.0
  %3045 = vmatprep.subr.mxu0 0.0
  %3046 = vmatpush2.msra.mxu0 0.0
  %3047 = vmatprep.mubr.f32.mxu0 0.0
  %3048 = vmatmul.mubr.f32.gmra.mxu0 %v2936
  %v3049 = vpop.f32.mrf.mxu0
  %v3050 = vadd.f32 0.0, %v3049
  %v3051 = vpop.f32.mrf.mxu0
  %3052 = vmatprep.mubr.f32.mxu0 0.0
  %3053 = vmatmul.mubr.f32.gmra.mxu0 %v2939
  %v3054 = vpop.f32.mrf.mxu0
  %v3055 = vadd.f32 0.0, %v3054
  %v3056 = vpop.f32.mrf.mxu0
  %3057 = vmatprep.mubr.f32.mxu0 0.0
  %3058 = vmatmul.mubr.f32.gmra.mxu0 %v2942
  %v3059 = vpop.f32.mrf.mxu0
  %v3060 = vadd.f32 0.0, %v3059
  %v3061 = vpop.f32.mrf.mxu0
  %3062 = vmatprep.mubr.f32.mxu0 0.0
  %3063 = vmatmul.mubr.f32.gmra.mxu0 %v2945
  %v3064 = vpop.f32.mrf.mxu0
  %v3065 = vadd.f32 0.0, %v3064
  %v3066 = vpop.f32.mrf.mxu0
  %3067 = vmatprep.mubr.f32.mxu0 0.0
  %3068 = vmatmul.mubr.f32.gmra.mxu0 %v2948
  %v3069 = vpop.f32.mrf.mxu0
  %v3070 = vadd.f32 0.0, %v3069
  %v3071 = vpop.f32.mrf.mxu0
  %3072 = vmatprep.mubr.f32.mxu0 0.0
  %3073 = vmatmul.mubr.f32.gmra.mxu0 %v2951
  %v3074 = vpop.f32.mrf.mxu0
  %v3075 = vadd.f32 0.0, %v3074
  %v3076 = vpop.f32.mrf.mxu0
  %3077 = vmatprep.mubr.f32.mxu0 0.0
  %3078 = vmatmul.mubr.f32.gmra.mxu0 %v2954
  %v3079 = vpop.f32.mrf.mxu0
  %v3080 = vadd.f32 0.0, %v3079
  %v3081 = vpop.f32.mrf.mxu0
  %3082 = vmatprep.mubr.f32.mxu0 0.0
  %3083 = vmatmul.mubr.f32.gmra.mxu0 %v2957
  %v3084 = vpop.f32.mrf.mxu0
  %v3085 = vadd.f32 0.0, %v3084
  %v3086 = vpop.f32.mrf.mxu0
  %3087 = vmatprep.mubr.f32.mxu0 0.0
  %3088 = vmatmul.mubr.f32.gmra.mxu0 %v2960
  %v3089 = vpop.f32.mrf.mxu0
  %v3090 = vadd.f32 0.0, %v3089
  %v3091 = vpop.f32.mrf.mxu0
  %3092 = vmatprep.mubr.f32.mxu0 0.0
  %3093 = vmatmul.mubr.f32.gmra.mxu0 %v2963
  %v3094 = vpop.f32.mrf.mxu0
  %v3095 = vadd.f32 0.0, %v3094
  %v3096 = vpop.f32.mrf.mxu0
  %3097 = vmatprep.mubr.f32.mxu0 0.0
  %3098 = vmatmul.mubr.f32.gmra.mxu0 %v2966
  %v3099 = vpop.f32.mrf.mxu0
  %v3100 = vadd.f32 0.0, %v3099
  %v3101 = vpop.f32.mrf.mxu0
  %3102 = vmatprep.mubr.f32.mxu0 0.0
  %3103 = vmatmul.mubr.f32.gmra.mxu0 %v2969
  %v3104 = vpop.f32.mrf.mxu0
  %v3105 = vadd.f32 0.0, %v3104
  %v3106 = vpop.f32.mrf.mxu0
  %3107 = vmatprep.mubr.f32.mxu0 0.0
  %3108 = vmatmul.mubr.f32.gmra.mxu0 %v2972
  %v3109 = vpop.f32.mrf.mxu0
  %v3110 = vadd.f32 0.0, %v3109
  %v3111 = vpop.f32.mrf.mxu0
  %3112 = vmatprep.mubr.f32.mxu0 0.0
  %3113 = vmatmul.mubr.f32.gmra.mxu0 %v2975
  %v3114 = vpop.f32.mrf.mxu0
  %v3115 = vadd.f32 0.0, %v3114
  %v3116 = vpop.f32.mrf.mxu0
  %3117 = vmatprep.mubr.f32.mxu0 0.0
  %3118 = vmatmul.mubr.f32.gmra.mxu0 %v2978
  %v3119 = vpop.f32.mrf.mxu0
  %v3120 = vadd.f32 0.0, %v3119
  %v3121 = vpop.f32.mrf.mxu0
  %3122 = vmatprep.mubr.f32.mxu0 0.0
  %3123 = vmatmul.mubr.f32.gmra.mxu0 %v2981
  %v3124 = vpop.f32.mrf.mxu0
  %v3125 = vadd.f32 0.0, %v3124
  %v3126 = vpop.f32.mrf.mxu0
  %3127 = vdwg.mxu0
  %v3128 = vadd.f32 %v2752, %v3050
  %v3129 = vadd.f32 %v2753, %v3055
  %v3130 = vadd.f32 %v2754, %v3060
  %v3131 = vadd.f32 %v2755, %v3065
  %v3132 = vadd.f32 %v2756, %v3070
  %v3133 = vadd.f32 %v2757, %v3075
  %v3134 = vadd.f32 %v2758, %v3080
  %v3135 = vadd.f32 %v2759, %v3085
  %v3136 = vadd.f32 %v2760, %v3090
  %v3137 = vadd.f32 %v2761, %v3095
  %v3138 = vadd.f32 %v2762, %v3100
  %v3139 = vadd.f32 %v2763, %v3105
  %v3140 = vadd.f32 %v2764, %v3110
  %v3141 = vadd.f32 %v2765, %v3115
  %v3142 = vadd.f32 %v2766, %v3120
  %v3143 = vadd.f32 %v2767, %v3125
  %s3144 = scalar_lea.vmem %s1, 1536
  %v3145 = vld [vmem:[%s3144] sm:$0xff]
  %v3146 = vld [vmem:[%s3144 + $0x8] sm:$0xff]
  %v3147 = vld [vmem:[%s3144 + $0x10] sm:$0xff]
  %v3148 = vld [vmem:[%s3144 + $0x18] sm:$0xff]
  %v3149 = vld [vmem:[%s3144 + $0x20] sm:$0xff]
  %v3150 = vld [vmem:[%s3144 + $0x28] sm:$0xff]
  %v3151 = vld [vmem:[%s3144 + $0x30] sm:$0xff]
  %v3152 = vld [vmem:[%s3144 + $0x38] sm:$0xff]
  %v3153 = vld [vmem:[%s3144 + $0x40] sm:$0xff]
  %v3154 = vld [vmem:[%s3144 + $0x48] sm:$0xff]
  %v3155 = vld [vmem:[%s3144 + $0x50] sm:$0xff]
  %v3156 = vld [vmem:[%s3144 + $0x58] sm:$0xff]
  %v3157 = vld [vmem:[%s3144 + $0x60] sm:$0xff]
  %v3158 = vld [vmem:[%s3144 + $0x68] sm:$0xff]
  %v3159 = vld [vmem:[%s3144 + $0x70] sm:$0xff]
  %v3160 = vld [vmem:[%s3144 + $0x78] sm:$0xff]
  %3161 = vmatprep.subr.mxu0 0.0
  %3162 = vmatpush1.msra.mxu0 %v290
  %3163 = vmatprep.subr.mxu0 0.0
  %3164 = vmatpush1.msra.mxu0 %v289
  %3165 = vmatprep.subr.mxu0 0.0
  %3166 = vmatpush1.msra.mxu0 %v288
  %3167 = vmatprep.subr.mxu0 0.0
  %3168 = vmatpush1.msra.mxu0 %v287
  %3169 = vmatprep.subr.mxu0 0.0
  %3170 = vmatpush1.msra.mxu0 %v286
  %3171 = vmatprep.subr.mxu0 0.0
  %3172 = vmatpush1.msra.mxu0 %v285
  %3173 = vmatprep.subr.mxu0 0.0
  %3174 = vmatpush1.msra.mxu0 %v284
  %3175 = vmatprep.subr.mxu0 0.0
  %3176 = vmatpush1.msra.mxu0 %v283
  %3177 = vmatprep.subr.mxu0 0.0
  %3178 = vmatpush1.msra.mxu0 %v282
  %3179 = vmatprep.subr.mxu0 0.0
  %3180 = vmatpush1.msra.mxu0 %v281
  %3181 = vmatprep.subr.mxu0 0.0
  %3182 = vmatpush1.msra.mxu0 %v280
  %3183 = vmatprep.subr.mxu0 0.0
  %3184 = vmatpush1.msra.mxu0 %v279
  %3185 = vmatprep.subr.mxu0 0.0
  %3186 = vmatpush1.msra.mxu0 %v278
  %3187 = vmatprep.subr.mxu0 0.0
  %3188 = vmatpush1.msra.mxu0 %v277
  %3189 = vmatprep.subr.mxu0 0.0
  %3190 = vmatpush1.msra.mxu0 %v276
  %3191 = vmatprep.subr.mxu0 0.0
  %3192 = vmatpush1.msra.mxu0 %v275
  %3193 = vmatprep.subr.mxu0 0.0
  %3194 = vmatpush2.msra.mxu0 0.0
  %3195 = vmatprep.subr.mxu0 0.0
  %3196 = vmatpush2.msra.mxu0 0.0
  %3197 = vmatprep.subr.mxu0 0.0
  %3198 = vmatpush2.msra.mxu0 0.0
  %3199 = vmatprep.subr.mxu0 0.0
  %3200 = vmatpush2.msra.mxu0 0.0
  %3201 = vmatprep.subr.mxu0 0.0
  %3202 = vmatpush2.msra.mxu0 0.0
  %3203 = vmatprep.subr.mxu0 0.0
  %3204 = vmatpush2.msra.mxu0 0.0
  %3205 = vmatprep.subr.mxu0 0.0
  %3206 = vmatpush2.msra.mxu0 0.0
  %3207 = vmatprep.subr.mxu0 0.0
  %3208 = vmatpush2.msra.mxu0 0.0
  %3209 = vmatprep.subr.mxu0 0.0
  %3210 = vmatpush2.msra.mxu0 0.0
  %3211 = vmatprep.subr.mxu0 0.0
  %3212 = vmatpush2.msra.mxu0 0.0
  %3213 = vmatprep.subr.mxu0 0.0
  %3214 = vmatpush2.msra.mxu0 0.0
  %3215 = vmatprep.subr.mxu0 0.0
  %3216 = vmatpush2.msra.mxu0 0.0
  %3217 = vmatprep.subr.mxu0 0.0
  %3218 = vmatpush2.msra.mxu0 0.0
  %3219 = vmatprep.subr.mxu0 0.0
  %3220 = vmatpush2.msra.mxu0 0.0
  %3221 = vmatprep.subr.mxu0 0.0
  %3222 = vmatpush2.msra.mxu0 0.0
  %3223 = vmatprep.subr.mxu0 0.0
  %3224 = vmatpush2.msra.mxu0 0.0
  %3225 = vmatprep.mubr.f32.mxu0 0.0
  %3226 = vmatmul.mubr.f32.gmra.mxu0 %v3145
  %v3227 = vpop.f32.mrf.mxu0
  %v3228 = vadd.f32 0.0, %v3227
  %v3229 = vpop.f32.mrf.mxu0
  %3230 = vmatprep.mubr.f32.mxu0 0.0
  %3231 = vmatmul.mubr.f32.gmra.mxu0 %v3146
  %v3232 = vpop.f32.mrf.mxu0
  %v3233 = vadd.f32 0.0, %v3232
  %v3234 = vpop.f32.mrf.mxu0
  %3235 = vmatprep.mubr.f32.mxu0 0.0
  %3236 = vmatmul.mubr.f32.gmra.mxu0 %v3147
  %v3237 = vpop.f32.mrf.mxu0
  %v3238 = vadd.f32 0.0, %v3237
  %v3239 = vpop.f32.mrf.mxu0
  %3240 = vmatprep.mubr.f32.mxu0 0.0
  %3241 = vmatmul.mubr.f32.gmra.mxu0 %v3148
  %v3242 = vpop.f32.mrf.mxu0
  %v3243 = vadd.f32 0.0, %v3242
  %v3244 = vpop.f32.mrf.mxu0
  %3245 = vmatprep.mubr.f32.mxu0 0.0
  %3246 = vmatmul.mubr.f32.gmra.mxu0 %v3149
  %v3247 = vpop.f32.mrf.mxu0
  %v3248 = vadd.f32 0.0, %v3247
  %v3249 = vpop.f32.mrf.mxu0
  %3250 = vmatprep.mubr.f32.mxu0 0.0
  %3251 = vmatmul.mubr.f32.gmra.mxu0 %v3150
  %v3252 = vpop.f32.mrf.mxu0
  %v3253 = vadd.f32 0.0, %v3252
  %v3254 = vpop.f32.mrf.mxu0
  %3255 = vmatprep.mubr.f32.mxu0 0.0
  %3256 = vmatmul.mubr.f32.gmra.mxu0 %v3151
  %v3257 = vpop.f32.mrf.mxu0
  %v3258 = vadd.f32 0.0, %v3257
  %v3259 = vpop.f32.mrf.mxu0
  %3260 = vmatprep.mubr.f32.mxu0 0.0
  %3261 = vmatmul.mubr.f32.gmra.mxu0 %v3152
  %v3262 = vpop.f32.mrf.mxu0
  %v3263 = vadd.f32 0.0, %v3262
  %v3264 = vpop.f32.mrf.mxu0
  %3265 = vmatprep.mubr.f32.mxu0 0.0
  %3266 = vmatmul.mubr.f32.gmra.mxu0 %v3153
  %v3267 = vpop.f32.mrf.mxu0
  %v3268 = vadd.f32 0.0, %v3267
  %v3269 = vpop.f32.mrf.mxu0
  %3270 = vmatprep.mubr.f32.mxu0 0.0
  %3271 = vmatmul.mubr.f32.gmra.mxu0 %v3154
  %v3272 = vpop.f32.mrf.mxu0
  %v3273 = vadd.f32 0.0, %v3272
  %v3274 = vpop.f32.mrf.mxu0
  %3275 = vmatprep.mubr.f32.mxu0 0.0
  %3276 = vmatmul.mubr.f32.gmra.mxu0 %v3155
  %v3277 = vpop.f32.mrf.mxu0
  %v3278 = vadd.f32 0.0, %v3277
  %v3279 = vpop.f32.mrf.mxu0
  %3280 = vmatprep.mubr.f32.mxu0 0.0
  %3281 = vmatmul.mubr.f32.gmra.mxu0 %v3156
  %v3282 = vpop.f32.mrf.mxu0
  %v3283 = vadd.f32 0.0, %v3282
  %v3284 = vpop.f32.mrf.mxu0
  %3285 = vmatprep.mubr.f32.mxu0 0.0
  %3286 = vmatmul.mubr.f32.gmra.mxu0 %v3157
  %v3287 = vpop.f32.mrf.mxu0
  %v3288 = vadd.f32 0.0, %v3287
  %v3289 = vpop.f32.mrf.mxu0
  %3290 = vmatprep.mubr.f32.mxu0 0.0
  %3291 = vmatmul.mubr.f32.gmra.mxu0 %v3158
  %v3292 = vpop.f32.mrf.mxu0
  %v3293 = vadd.f32 0.0, %v3292
  %v3294 = vpop.f32.mrf.mxu0
  %3295 = vmatprep.mubr.f32.mxu0 0.0
  %3296 = vmatmul.mubr.f32.gmra.mxu0 %v3159
  %v3297 = vpop.f32.mrf.mxu0
  %v3298 = vadd.f32 0.0, %v3297
  %v3299 = vpop.f32.mrf.mxu0
  %3300 = vmatprep.mubr.f32.mxu0 0.0
  %3301 = vmatmul.mubr.f32.gmra.mxu0 %v3160
  %v3302 = vpop.f32.mrf.mxu0
  %v3303 = vadd.f32 0.0, %v3302
  %v3304 = vpop.f32.mrf.mxu0
  %3305 = vdwg.mxu0
  %s3306 = scalar_lea.vmem %s4, 256
  %v3307 = vld [vmem:[%s3306] sm:$0xff]
  %v3308 = vld [vmem:[%s3306 + $0x8] sm:$0xff]
  %v3309 = vld [vmem:[%s3306 + $0x10] sm:$0xff]
  %v3310 = vld [vmem:[%s3306 + $0x18] sm:$0xff]
  %v3312 = vsel %vm458, %v3228, 0
  %v3315 = vsel %vm458, %v3233, 0
  %v3318 = vsel %vm458, %v3238, 0
  %v3321 = vsel %vm458, %v3243, 0
  %v3324 = vsel %vm458, %v3248, 0
  %v3327 = vsel %vm458, %v3253, 0
  %v3330 = vsel %vm458, %v3258, 0
  %v3333 = vsel %vm458, %v3263, 0
  %v3336 = vsel %vm458, %v3268, 0
  %v3339 = vsel %vm458, %v3273, 0
  %v3342 = vsel %vm458, %v3278, 0
  %v3345 = vsel %vm458, %v3283, 0
  %v3348 = vsel %vm458, %v3288, 0
  %v3351 = vsel %vm458, %v3293, 0
  %v3354 = vsel %vm458, %v3298, 0
  %v3357 = vsel %vm458, %v3303, 0
  %3359 = vmatprep.subr.mxu0 0.0
  %3360 = vmatpush1.msra.mxu0 0.0
  %3361 = vmatprep.subr.mxu0 0.0
  %3362 = vmatpush1.msra.mxu0 0.0
  %3363 = vmatprep.subr.mxu0 0.0
  %3364 = vmatpush1.msra.mxu0 0.0
  %3365 = vmatprep.subr.mxu0 0.0
  %3366 = vmatpush1.msra.mxu0 0.0
  %3367 = vmatprep.subr.mxu0 0.0
  %3368 = vmatpush1.msra.mxu0 0.0
  %3369 = vmatprep.subr.mxu0 0.0
  %3370 = vmatpush1.msra.mxu0 0.0
  %3371 = vmatprep.subr.mxu0 0.0
  %3372 = vmatpush1.msra.mxu0 0.0
  %3373 = vmatprep.subr.mxu0 0.0
  %3374 = vmatpush1.msra.mxu0 0.0
  %3375 = vmatprep.subr.mxu0 0.0
  %3376 = vmatpush1.msra.mxu0 0.0
  %3377 = vmatprep.subr.mxu0 0.0
  %3378 = vmatpush1.msra.mxu0 0.0
  %3379 = vmatprep.subr.mxu0 0.0
  %3380 = vmatpush1.msra.mxu0 0.0
  %3381 = vmatprep.subr.mxu0 0.0
  %3382 = vmatpush1.msra.mxu0 0.0
  %3383 = vmatprep.subr.mxu0 0.0
  %3384 = vmatpush1.msra.mxu0 %v3310
  %3385 = vmatprep.subr.mxu0 0.0
  %3386 = vmatpush1.msra.mxu0 %v3309
  %3387 = vmatprep.subr.mxu0 0.0
  %3388 = vmatpush1.msra.mxu0 %v3308
  %3389 = vmatprep.subr.mxu0 0.0
  %3390 = vmatpush1.msra.mxu0 %v3307
  %3391 = vmatprep.subr.mxu0 0.0
  %3392 = vmatpush2.msra.mxu0 0.0
  %3393 = vmatprep.subr.mxu0 0.0
  %3394 = vmatpush2.msra.mxu0 0.0
  %3395 = vmatprep.subr.mxu0 0.0
  %3396 = vmatpush2.msra.mxu0 0.0
  %3397 = vmatprep.subr.mxu0 0.0
  %3398 = vmatpush2.msra.mxu0 0.0
  %3399 = vmatprep.subr.mxu0 0.0
  %3400 = vmatpush2.msra.mxu0 0.0
  %3401 = vmatprep.subr.mxu0 0.0
  %3402 = vmatpush2.msra.mxu0 0.0
  %3403 = vmatprep.subr.mxu0 0.0
  %3404 = vmatpush2.msra.mxu0 0.0
  %3405 = vmatprep.subr.mxu0 0.0
  %3406 = vmatpush2.msra.mxu0 0.0
  %3407 = vmatprep.subr.mxu0 0.0
  %3408 = vmatpush2.msra.mxu0 0.0
  %3409 = vmatprep.subr.mxu0 0.0
  %3410 = vmatpush2.msra.mxu0 0.0
  %3411 = vmatprep.subr.mxu0 0.0
  %3412 = vmatpush2.msra.mxu0 0.0
  %3413 = vmatprep.subr.mxu0 0.0
  %3414 = vmatpush2.msra.mxu0 0.0
  %3415 = vmatprep.subr.mxu0 0.0
  %3416 = vmatpush2.msra.mxu0 0.0
  %3417 = vmatprep.subr.mxu0 0.0
  %3418 = vmatpush2.msra.mxu0 0.0
  %3419 = vmatprep.subr.mxu0 0.0
  %3420 = vmatpush2.msra.mxu0 0.0
  %3421 = vmatprep.subr.mxu0 0.0
  %3422 = vmatpush2.msra.mxu0 0.0
  %3423 = vmatprep.mubr.f32.mxu0 0.0
  %3424 = vmatmul.mubr.f32.gmra.mxu0 %v3312
  %v3425 = vpop.f32.mrf.mxu0
  %v3426 = vadd.f32 0.0, %v3425
  %v3427 = vpop.f32.mrf.mxu0
  %3428 = vmatprep.mubr.f32.mxu0 0.0
  %3429 = vmatmul.mubr.f32.gmra.mxu0 %v3315
  %v3430 = vpop.f32.mrf.mxu0
  %v3431 = vadd.f32 0.0, %v3430
  %v3432 = vpop.f32.mrf.mxu0
  %3433 = vmatprep.mubr.f32.mxu0 0.0
  %3434 = vmatmul.mubr.f32.gmra.mxu0 %v3318
  %v3435 = vpop.f32.mrf.mxu0
  %v3436 = vadd.f32 0.0, %v3435
  %v3437 = vpop.f32.mrf.mxu0
  %3438 = vmatprep.mubr.f32.mxu0 0.0
  %3439 = vmatmul.mubr.f32.gmra.mxu0 %v3321
  %v3440 = vpop.f32.mrf.mxu0
  %v3441 = vadd.f32 0.0, %v3440
  %v3442 = vpop.f32.mrf.mxu0
  %3443 = vmatprep.mubr.f32.mxu0 0.0
  %3444 = vmatmul.mubr.f32.gmra.mxu0 %v3324
  %v3445 = vpop.f32.mrf.mxu0
  %v3446 = vadd.f32 0.0, %v3445
  %v3447 = vpop.f32.mrf.mxu0
  %3448 = vmatprep.mubr.f32.mxu0 0.0
  %3449 = vmatmul.mubr.f32.gmra.mxu0 %v3327
  %v3450 = vpop.f32.mrf.mxu0
  %v3451 = vadd.f32 0.0, %v3450
  %v3452 = vpop.f32.mrf.mxu0
  %3453 = vmatprep.mubr.f32.mxu0 0.0
  %3454 = vmatmul.mubr.f32.gmra.mxu0 %v3330
  %v3455 = vpop.f32.mrf.mxu0
  %v3456 = vadd.f32 0.0, %v3455
  %v3457 = vpop.f32.mrf.mxu0
  %3458 = vmatprep.mubr.f32.mxu0 0.0
  %3459 = vmatmul.mubr.f32.gmra.mxu0 %v3333
  %v3460 = vpop.f32.mrf.mxu0
  %v3461 = vadd.f32 0.0, %v3460
  %v3462 = vpop.f32.mrf.mxu0
  %3463 = vmatprep.mubr.f32.mxu0 0.0
  %3464 = vmatmul.mubr.f32.gmra.mxu0 %v3336
  %v3465 = vpop.f32.mrf.mxu0
  %v3466 = vadd.f32 0.0, %v3465
  %v3467 = vpop.f32.mrf.mxu0
  %3468 = vmatprep.mubr.f32.mxu0 0.0
  %3469 = vmatmul.mubr.f32.gmra.mxu0 %v3339
  %v3470 = vpop.f32.mrf.mxu0
  %v3471 = vadd.f32 0.0, %v3470
  %v3472 = vpop.f32.mrf.mxu0
  %3473 = vmatprep.mubr.f32.mxu0 0.0
  %3474 = vmatmul.mubr.f32.gmra.mxu0 %v3342
  %v3475 = vpop.f32.mrf.mxu0
  %v3476 = vadd.f32 0.0, %v3475
  %v3477 = vpop.f32.mrf.mxu0
  %3478 = vmatprep.mubr.f32.mxu0 0.0
  %3479 = vmatmul.mubr.f32.gmra.mxu0 %v3345
  %v3480 = vpop.f32.mrf.mxu0
  %v3481 = vadd.f32 0.0, %v3480
  %v3482 = vpop.f32.mrf.mxu0
  %3483 = vmatprep.mubr.f32.mxu0 0.0
  %3484 = vmatmul.mubr.f32.gmra.mxu0 %v3348
  %v3485 = vpop.f32.mrf.mxu0
  %v3486 = vadd.f32 0.0, %v3485
  %v3487 = vpop.f32.mrf.mxu0
  %3488 = vmatprep.mubr.f32.mxu0 0.0
  %3489 = vmatmul.mubr.f32.gmra.mxu0 %v3351
  %v3490 = vpop.f32.mrf.mxu0
  %v3491 = vadd.f32 0.0, %v3490
  %v3492 = vpop.f32.mrf.mxu0
  %3493 = vmatprep.mubr.f32.mxu0 0.0
  %3494 = vmatmul.mubr.f32.gmra.mxu0 %v3354
  %v3495 = vpop.f32.mrf.mxu0
  %v3496 = vadd.f32 0.0, %v3495
  %v3497 = vpop.f32.mrf.mxu0
  %3498 = vmatprep.mubr.f32.mxu0 0.0
  %3499 = vmatmul.mubr.f32.gmra.mxu0 %v3357
  %v3500 = vpop.f32.mrf.mxu0
  %v3501 = vadd.f32 0.0, %v3500
  %v3502 = vpop.f32.mrf.mxu0
  %3503 = vdwg.mxu0
  %v3504 = vadd.f32 %v3128, %v3426
  %v3505 = vadd.f32 %v3129, %v3431
  %v3506 = vadd.f32 %v3130, %v3436
  %v3507 = vadd.f32 %v3131, %v3441
  %v3508 = vadd.f32 %v3132, %v3446
  %v3509 = vadd.f32 %v3133, %v3451
  %v3510 = vadd.f32 %v3134, %v3456
  %v3511 = vadd.f32 %v3135, %v3461
  %v3512 = vadd.f32 %v3136, %v3466
  %v3513 = vadd.f32 %v3137, %v3471
  %v3514 = vadd.f32 %v3138, %v3476
  %v3515 = vadd.f32 %v3139, %v3481
  %v3516 = vadd.f32 %v3140, %v3486
  %v3517 = vadd.f32 %v3141, %v3491
  %v3518 = vadd.f32 %v3142, %v3496
  %v3519 = vadd.f32 %v3143, %v3501
  %v3520 = vmax.f32 %v3504, 0.0
  %v3521 = vmax.f32 %v3505, 0.0
  %v3522 = vmax.f32 %v3506, 0.0
  %v3523 = vmax.f32 %v3507, 0.0
  %v3524 = vmax.f32 %v3508, 0.0
  %v3525 = vmax.f32 %v3509, 0.0
  %v3526 = vmax.f32 %v3510, 0.0
  %v3527 = vmax.f32 %v3511, 0.0
  %v3528 = vmax.f32 %v3512, 0.0
  %v3529 = vmax.f32 %v3513, 0.0
  %v3530 = vmax.f32 %v3514, 0.0
  %v3531 = vmax.f32 %v3515, 0.0
  %v3532 = vmax.f32 %v3516, 0.0
  %v3533 = vmax.f32 %v3517, 0.0
  %v3534 = vmax.f32 %v3518, 0.0
  %v3535 = vmax.f32 %v3519, 0.0
  %v3536 = vld [vmem:[%s7] sm:$0x1]
  %3537 = vmatprep.subr.mxu0 0.0
  %3538 = vmatpush1.msra.mxu0 %v3535
  %3539 = vmatprep.subr.mxu0 0.0
  %3540 = vmatpush1.msra.mxu0 %v3534
  %3541 = vmatprep.subr.mxu0 0.0
  %3542 = vmatpush1.msra.mxu0 %v3533
  %3543 = vmatprep.subr.mxu0 0.0
  %3544 = vmatpush1.msra.mxu0 %v3532
  %3545 = vmatprep.subr.mxu0 0.0
  %3546 = vmatpush1.msra.mxu0 %v3531
  %3547 = vmatprep.subr.mxu0 0.0
  %3548 = vmatpush1.msra.mxu0 %v3530
  %3549 = vmatprep.subr.mxu0 0.0
  %3550 = vmatpush1.msra.mxu0 %v3529
  %3551 = vmatprep.subr.mxu0 0.0
  %3552 = vmatpush1.msra.mxu0 %v3528
  %3553 = vmatprep.subr.mxu0 0.0
  %3554 = vmatpush1.msra.mxu0 %v3527
  %3555 = vmatprep.subr.mxu0 0.0
  %3556 = vmatpush1.msra.mxu0 %v3526
  %3557 = vmatprep.subr.mxu0 0.0
  %3558 = vmatpush1.msra.mxu0 %v3525
  %3559 = vmatprep.subr.mxu0 0.0
  %3560 = vmatpush1.msra.mxu0 %v3524
  %3561 = vmatprep.subr.mxu0 0.0
  %3562 = vmatpush1.msra.mxu0 %v3523
  %3563 = vmatprep.subr.mxu0 0.0
  %3564 = vmatpush1.msra.mxu0 %v3522
  %3565 = vmatprep.subr.mxu0 0.0
  %3566 = vmatpush1.msra.mxu0 %v3521
  %3567 = vmatprep.subr.mxu0 0.0
  %3568 = vmatpush1.msra.mxu0 %v3520
  %3569 = vmatprep.subr.mxu0 0.0
  %3570 = vmatpush2.msra.mxu0 0.0
  %3571 = vmatprep.subr.mxu0 0.0
  %3572 = vmatpush2.msra.mxu0 0.0
  %3573 = vmatprep.subr.mxu0 0.0
  %3574 = vmatpush2.msra.mxu0 0.0
  %3575 = vmatprep.subr.mxu0 0.0
  %3576 = vmatpush2.msra.mxu0 0.0
  %3577 = vmatprep.subr.mxu0 0.0
  %3578 = vmatpush2.msra.mxu0 0.0
  %3579 = vmatprep.subr.mxu0 0.0
  %3580 = vmatpush2.msra.mxu0 0.0
  %3581 = vmatprep.subr.mxu0 0.0
  %3582 = vmatpush2.msra.mxu0 0.0
  %3583 = vmatprep.subr.mxu0 0.0
  %3584 = vmatpush2.msra.mxu0 0.0
  %3585 = vmatprep.subr.mxu0 0.0
  %3586 = vmatpush2.msra.mxu0 0.0
  %3587 = vmatprep.subr.mxu0 0.0
  %3588 = vmatpush2.msra.mxu0 0.0
  %3589 = vmatprep.subr.mxu0 0.0
  %3590 = vmatpush2.msra.mxu0 0.0
  %3591 = vmatprep.subr.mxu0 0.0
  %3592 = vmatpush2.msra.mxu0 0.0
  %3593 = vmatprep.subr.mxu0 0.0
  %3594 = vmatpush2.msra.mxu0 0.0
  %3595 = vmatprep.subr.mxu0 0.0
  %3596 = vmatpush2.msra.mxu0 0.0
  %3597 = vmatprep.subr.mxu0 0.0
  %3598 = vmatpush2.msra.mxu0 0.0
  %3599 = vmatprep.subr.mxu0 0.0
  %3600 = vmatpush2.msra.mxu0 0.0
  %3601 = vmatprep.mubr.f32.mxu0 0.0
  %3602 = vmatmul.mubr.f32.gmra.mxu0 %v293
  %v3603 = vpop.f32.mrf.mxu0
  %v3604 = vadd.f32 0.0, %v3603
  %v3605 = vpop.f32.mrf.mxu0
  %3606 = vmatprep.mubr.f32.mxu0 0.0
  %3607 = vmatmul.mubr.f32.gmra.mxu0 %v294
  %v3608 = vpop.f32.mrf.mxu0
  %v3609 = vadd.f32 0.0, %v3608
  %v3610 = vpop.f32.mrf.mxu0
  %3611 = vmatprep.mubr.f32.mxu0 0.0
  %3612 = vmatmul.mubr.f32.gmra.mxu0 %v295
  %v3613 = vpop.f32.mrf.mxu0
  %v3614 = vadd.f32 0.0, %v3613
  %v3615 = vpop.f32.mrf.mxu0
  %3616 = vmatprep.mubr.f32.mxu0 0.0
  %3617 = vmatmul.mubr.f32.gmra.mxu0 %v296
  %v3618 = vpop.f32.mrf.mxu0
  %v3619 = vadd.f32 0.0, %v3618
  %v3620 = vpop.f32.mrf.mxu0
  %3621 = vmatprep.mubr.f32.mxu0 0.0
  %3622 = vmatmul.mubr.f32.gmra.mxu0 %v297
  %v3623 = vpop.f32.mrf.mxu0
  %v3624 = vadd.f32 0.0, %v3623
  %v3625 = vpop.f32.mrf.mxu0
  %3626 = vmatprep.mubr.f32.mxu0 0.0
  %3627 = vmatmul.mubr.f32.gmra.mxu0 %v298
  %v3628 = vpop.f32.mrf.mxu0
  %v3629 = vadd.f32 0.0, %v3628
  %v3630 = vpop.f32.mrf.mxu0
  %3631 = vmatprep.mubr.f32.mxu0 0.0
  %3632 = vmatmul.mubr.f32.gmra.mxu0 %v299
  %v3633 = vpop.f32.mrf.mxu0
  %v3634 = vadd.f32 0.0, %v3633
  %v3635 = vpop.f32.mrf.mxu0
  %3636 = vmatprep.mubr.f32.mxu0 0.0
  %3637 = vmatmul.mubr.f32.gmra.mxu0 %v300
  %v3638 = vpop.f32.mrf.mxu0
  %v3639 = vadd.f32 0.0, %v3638
  %v3640 = vpop.f32.mrf.mxu0
  %3641 = vmatprep.mubr.f32.mxu0 0.0
  %3642 = vmatmul.mubr.f32.gmra.mxu0 %v301
  %v3643 = vpop.f32.mrf.mxu0
  %v3644 = vadd.f32 0.0, %v3643
  %v3645 = vpop.f32.mrf.mxu0
  %3646 = vmatprep.mubr.f32.mxu0 0.0
  %3647 = vmatmul.mubr.f32.gmra.mxu0 %v302
  %v3648 = vpop.f32.mrf.mxu0
  %v3649 = vadd.f32 0.0, %v3648
  %v3650 = vpop.f32.mrf.mxu0
  %3651 = vmatprep.mubr.f32.mxu0 0.0
  %3652 = vmatmul.mubr.f32.gmra.mxu0 %v303
  %v3653 = vpop.f32.mrf.mxu0
  %v3654 = vadd.f32 0.0, %v3653
  %v3655 = vpop.f32.mrf.mxu0
  %3656 = vmatprep.mubr.f32.mxu0 0.0
  %3657 = vmatmul.mubr.f32.gmra.mxu0 %v304
  %v3658 = vpop.f32.mrf.mxu0
  %v3659 = vadd.f32 0.0, %v3658
  %v3660 = vpop.f32.mrf.mxu0
  %3661 = vmatprep.mubr.f32.mxu0 0.0
  %3662 = vmatmul.mubr.f32.gmra.mxu0 %v305
  %v3663 = vpop.f32.mrf.mxu0
  %v3664 = vadd.f32 0.0, %v3663
  %v3665 = vpop.f32.mrf.mxu0
  %3666 = vmatprep.mubr.f32.mxu0 0.0
  %3667 = vmatmul.mubr.f32.gmra.mxu0 %v306
  %v3668 = vpop.f32.mrf.mxu0
  %v3669 = vadd.f32 0.0, %v3668
  %v3670 = vpop.f32.mrf.mxu0
  %3671 = vmatprep.mubr.f32.mxu0 0.0
  %3672 = vmatmul.mubr.f32.gmra.mxu0 %v307
  %v3673 = vpop.f32.mrf.mxu0
  %v3674 = vadd.f32 0.0, %v3673
  %v3675 = vpop.f32.mrf.mxu0
  %3676 = vmatprep.mubr.f32.mxu0 0.0
  %3677 = vmatmul.mubr.f32.gmra.mxu0 %v308
  %v3678 = vpop.f32.mrf.mxu0
  %v3679 = vadd.f32 0.0, %v3678
  %v3680 = vpop.f32.mrf.mxu0
  %3681 = vdwg.mxu0
  %v3682 = vld [vmem:[%s6] sm:$0xff]
  %v3683 = vld [vmem:[%s6 + $0x8] sm:$0xff]
  %v3684 = vld [vmem:[%s6 + $0x10] sm:$0xff]
  %v3685 = vld [vmem:[%s6 + $0x18] sm:$0xff]
  %v3687 = vsel %vm458, %v3604, 0
  %v3690 = vsel %vm458, %v3609, 0
  %v3693 = vsel %vm458, %v3614, 0
  %v3696 = vsel %vm458, %v3619, 0
  %v3699 = vsel %vm458, %v3624, 0
  %v3702 = vsel %vm458, %v3629, 0
  %v3705 = vsel %vm458, %v3634, 0
  %v3708 = vsel %vm458, %v3639, 0
  %v3711 = vsel %vm458, %v3644, 0
  %v3714 = vsel %vm458, %v3649, 0
  %v3717 = vsel %vm458, %v3654, 0
  %v3720 = vsel %vm458, %v3659, 0
  %v3723 = vsel %vm458, %v3664, 0
  %v3726 = vsel %vm458, %v3669, 0
  %v3729 = vsel %vm458, %v3674, 0
  %v3732 = vsel %vm458, %v3679, 0
  %3734 = vmatprep.subr.mxu0 0.0
  %3735 = vmatpush1.msra.mxu0 0.0
  %3736 = vmatprep.subr.mxu0 0.0
  %3737 = vmatpush1.msra.mxu0 0.0
  %3738 = vmatprep.subr.mxu0 0.0
  %3739 = vmatpush1.msra.mxu0 0.0
  %3740 = vmatprep.subr.mxu0 0.0
  %3741 = vmatpush1.msra.mxu0 0.0
  %3742 = vmatprep.subr.mxu0 0.0
  %3743 = vmatpush1.msra.mxu0 0.0
  %3744 = vmatprep.subr.mxu0 0.0
  %3745 = vmatpush1.msra.mxu0 0.0
  %3746 = vmatprep.subr.mxu0 0.0
  %3747 = vmatpush1.msra.mxu0 0.0
  %3748 = vmatprep.subr.mxu0 0.0
  %3749 = vmatpush1.msra.mxu0 0.0
  %3750 = vmatprep.subr.mxu0 0.0
  %3751 = vmatpush1.msra.mxu0 0.0
  %3752 = vmatprep.subr.mxu0 0.0
  %3753 = vmatpush1.msra.mxu0 0.0
  %3754 = vmatprep.subr.mxu0 0.0
  %3755 = vmatpush1.msra.mxu0 0.0
  %3756 = vmatprep.subr.mxu0 0.0
  %3757 = vmatpush1.msra.mxu0 0.0
  %3758 = vmatprep.subr.mxu0 0.0
  %3759 = vmatpush1.msra.mxu0 %v3685
  %3760 = vmatprep.subr.mxu0 0.0
  %3761 = vmatpush1.msra.mxu0 %v3684
  %3762 = vmatprep.subr.mxu0 0.0
  %3763 = vmatpush1.msra.mxu0 %v3683
  %3764 = vmatprep.subr.mxu0 0.0
  %3765 = vmatpush1.msra.mxu0 %v3682
  %3766 = vmatprep.subr.mxu0 0.0
  %3767 = vmatpush2.msra.mxu0 0.0
  %3768 = vmatprep.subr.mxu0 0.0
  %3769 = vmatpush2.msra.mxu0 0.0
  %3770 = vmatprep.subr.mxu0 0.0
  %3771 = vmatpush2.msra.mxu0 0.0
  %3772 = vmatprep.subr.mxu0 0.0
  %3773 = vmatpush2.msra.mxu0 0.0
  %3774 = vmatprep.subr.mxu0 0.0
  %3775 = vmatpush2.msra.mxu0 0.0
  %3776 = vmatprep.subr.mxu0 0.0
  %3777 = vmatpush2.msra.mxu0 0.0
  %3778 = vmatprep.subr.mxu0 0.0
  %3779 = vmatpush2.msra.mxu0 0.0
  %3780 = vmatprep.subr.mxu0 0.0
  %3781 = vmatpush2.msra.mxu0 0.0
  %3782 = vmatprep.subr.mxu0 0.0
  %3783 = vmatpush2.msra.mxu0 0.0
  %3784 = vmatprep.subr.mxu0 0.0
  %3785 = vmatpush2.msra.mxu0 0.0
  %3786 = vmatprep.subr.mxu0 0.0
  %3787 = vmatpush2.msra.mxu0 0.0
  %3788 = vmatprep.subr.mxu0 0.0
  %3789 = vmatpush2.msra.mxu0 0.0
  %3790 = vmatprep.subr.mxu0 0.0
  %3791 = vmatpush2.msra.mxu0 0.0
  %3792 = vmatprep.subr.mxu0 0.0
  %3793 = vmatpush2.msra.mxu0 0.0
  %3794 = vmatprep.subr.mxu0 0.0
  %3795 = vmatpush2.msra.mxu0 0.0
  %3796 = vmatprep.subr.mxu0 0.0
  %3797 = vmatpush2.msra.mxu0 0.0
  %3798 = vmatprep.mubr.f32.mxu0 0.0
  %3799 = vmatmul.mubr.f32.gmra.mxu0 %v3687
  %v3800 = vpop.f32.mrf.mxu0
  %v3801 = vadd.f32 0.0, %v3800
  %v3802 = vpop.f32.mrf.mxu0
  %3803 = vmatprep.mubr.f32.mxu0 0.0
  %3804 = vmatmul.mubr.f32.gmra.mxu0 %v3690
  %v3805 = vpop.f32.mrf.mxu0
  %v3806 = vadd.f32 0.0, %v3805
  %v3807 = vpop.f32.mrf.mxu0
  %3808 = vmatprep.mubr.f32.mxu0 0.0
  %3809 = vmatmul.mubr.f32.gmra.mxu0 %v3693
  %v3810 = vpop.f32.mrf.mxu0
  %v3811 = vadd.f32 0.0, %v3810
  %v3812 = vpop.f32.mrf.mxu0
  %3813 = vmatprep.mubr.f32.mxu0 0.0
  %3814 = vmatmul.mubr.f32.gmra.mxu0 %v3696
  %v3815 = vpop.f32.mrf.mxu0
  %v3816 = vadd.f32 0.0, %v3815
  %v3817 = vpop.f32.mrf.mxu0
  %3818 = vmatprep.mubr.f32.mxu0 0.0
  %3819 = vmatmul.mubr.f32.gmra.mxu0 %v3699
  %v3820 = vpop.f32.mrf.mxu0
  %v3821 = vadd.f32 0.0, %v3820
  %v3822 = vpop.f32.mrf.mxu0
  %3823 = vmatprep.mubr.f32.mxu0 0.0
  %3824 = vmatmul.mubr.f32.gmra.mxu0 %v3702
  %v3825 = vpop.f32.mrf.mxu0
  %v3826 = vadd.f32 0.0, %v3825
  %v3827 = vpop.f32.mrf.mxu0
  %3828 = vmatprep.mubr.f32.mxu0 0.0
  %3829 = vmatmul.mubr.f32.gmra.mxu0 %v3705
  %v3830 = vpop.f32.mrf.mxu0
  %v3831 = vadd.f32 0.0, %v3830
  %v3832 = vpop.f32.mrf.mxu0
  %3833 = vmatprep.mubr.f32.mxu0 0.0
  %3834 = vmatmul.mubr.f32.gmra.mxu0 %v3708
  %v3835 = vpop.f32.mrf.mxu0
  %v3836 = vadd.f32 0.0, %v3835
  %v3837 = vpop.f32.mrf.mxu0
  %3838 = vmatprep.mubr.f32.mxu0 0.0
  %3839 = vmatmul.mubr.f32.gmra.mxu0 %v3711
  %v3840 = vpop.f32.mrf.mxu0
  %v3841 = vadd.f32 0.0, %v3840
  %v3842 = vpop.f32.mrf.mxu0
  %3843 = vmatprep.mubr.f32.mxu0 0.0
  %3844 = vmatmul.mubr.f32.gmra.mxu0 %v3714
  %v3845 = vpop.f32.mrf.mxu0
  %v3846 = vadd.f32 0.0, %v3845
  %v3847 = vpop.f32.mrf.mxu0
  %3848 = vmatprep.mubr.f32.mxu0 0.0
  %3849 = vmatmul.mubr.f32.gmra.mxu0 %v3717
  %v3850 = vpop.f32.mrf.mxu0
  %v3851 = vadd.f32 0.0, %v3850
  %v3852 = vpop.f32.mrf.mxu0
  %3853 = vmatprep.mubr.f32.mxu0 0.0
  %3854 = vmatmul.mubr.f32.gmra.mxu0 %v3720
  %v3855 = vpop.f32.mrf.mxu0
  %v3856 = vadd.f32 0.0, %v3855
  %v3857 = vpop.f32.mrf.mxu0
  %3858 = vmatprep.mubr.f32.mxu0 0.0
  %3859 = vmatmul.mubr.f32.gmra.mxu0 %v3723
  %v3860 = vpop.f32.mrf.mxu0
  %v3861 = vadd.f32 0.0, %v3860
  %v3862 = vpop.f32.mrf.mxu0
  %3863 = vmatprep.mubr.f32.mxu0 0.0
  %3864 = vmatmul.mubr.f32.gmra.mxu0 %v3726
  %v3865 = vpop.f32.mrf.mxu0
  %v3866 = vadd.f32 0.0, %v3865
  %v3867 = vpop.f32.mrf.mxu0
  %3868 = vmatprep.mubr.f32.mxu0 0.0
  %3869 = vmatmul.mubr.f32.gmra.mxu0 %v3729
  %v3870 = vpop.f32.mrf.mxu0
  %v3871 = vadd.f32 0.0, %v3870
  %v3872 = vpop.f32.mrf.mxu0
  %3873 = vmatprep.mubr.f32.mxu0 0.0
  %3874 = vmatmul.mubr.f32.gmra.mxu0 %v3732
  %v3875 = vpop.f32.mrf.mxu0
  %v3876 = vadd.f32 0.0, %v3875
  %v3877 = vpop.f32.mrf.mxu0
  %3878 = vdwg.mxu0
  %v3880 = vlaneseq
  %v3881 = vshrl.u32 %v3880, 7
  %v3882 = vsub.s32 0, %v3881
  %v3883 = vrot.slane %v3536, %v3882
  %v3885 = vadd.f32 %v3883, %v3801
  %v3886 = vadd.f32 %v3883, %v3806
  %v3887 = vadd.f32 %v3883, %v3811
  %v3888 = vadd.f32 %v3883, %v3816
  %v3889 = vadd.f32 %v3883, %v3821
  %v3890 = vadd.f32 %v3883, %v3826
  %v3891 = vadd.f32 %v3883, %v3831
  %v3892 = vadd.f32 %v3883, %v3836
  %v3893 = vadd.f32 %v3883, %v3841
  %v3894 = vadd.f32 %v3883, %v3846
  %v3895 = vadd.f32 %v3883, %v3851
  %v3896 = vadd.f32 %v3883, %v3856
  %v3897 = vadd.f32 %v3883, %v3861
  %v3898 = vadd.f32 %v3883, %v3866
  %v3899 = vadd.f32 %v3883, %v3871
  %v3900 = vadd.f32 %v3883, %v3876
  %3901 = vmatprep.subr.mxu0 0.0
  %3902 = vmatpush1.msra.mxu0 %v3535
  %3903 = vmatprep.subr.mxu0 0.0
  %3904 = vmatpush1.msra.mxu0 %v3534
  %3905 = vmatprep.subr.mxu0 0.0
  %3906 = vmatpush1.msra.mxu0 %v3533
  %3907 = vmatprep.subr.mxu0 0.0
  %3908 = vmatpush1.msra.mxu0 %v3532
  %3909 = vmatprep.subr.mxu0 0.0
  %3910 = vmatpush1.msra.mxu0 %v3531
  %3911 = vmatprep.subr.mxu0 0.0
  %3912 = vmatpush1.msra.mxu0 %v3530
  %3913 = vmatprep.subr.mxu0 0.0
  %3914 = vmatpush1.msra.mxu0 %v3529
  %3915 = vmatprep.subr.mxu0 0.0
  %3916 = vmatpush1.msra.mxu0 %v3528
  %3917 = vmatprep.subr.mxu0 0.0
  %3918 = vmatpush1.msra.mxu0 %v3527
  %3919 = vmatprep.subr.mxu0 0.0
  %3920 = vmatpush1.msra.mxu0 %v3526
  %3921 = vmatprep.subr.mxu0 0.0
  %3922 = vmatpush1.msra.mxu0 %v3525
  %3923 = vmatprep.subr.mxu0 0.0
  %3924 = vmatpush1.msra.mxu0 %v3524
  %3925 = vmatprep.subr.mxu0 0.0
  %3926 = vmatpush1.msra.mxu0 %v3523
  %3927 = vmatprep.subr.mxu0 0.0
  %3928 = vmatpush1.msra.mxu0 %v3522
  %3929 = vmatprep.subr.mxu0 0.0
  %3930 = vmatpush1.msra.mxu0 %v3521
  %3931 = vmatprep.subr.mxu0 0.0
  %3932 = vmatpush1.msra.mxu0 %v3520
  %3933 = vmatprep.subr.mxu0 0.0
  %3934 = vmatpush2.msra.mxu0 0.0
  %3935 = vmatprep.subr.mxu0 0.0
  %3936 = vmatpush2.msra.mxu0 0.0
  %3937 = vmatprep.subr.mxu0 0.0
  %3938 = vmatpush2.msra.mxu0 0.0
  %3939 = vmatprep.subr.mxu0 0.0
  %3940 = vmatpush2.msra.mxu0 0.0
  %3941 = vmatprep.subr.mxu0 0.0
  %3942 = vmatpush2.msra.mxu0 0.0
  %3943 = vmatprep.subr.mxu0 0.0
  %3944 = vmatpush2.msra.mxu0 0.0
  %3945 = vmatprep.subr.mxu0 0.0
  %3946 = vmatpush2.msra.mxu0 0.0
  %3947 = vmatprep.subr.mxu0 0.0
  %3948 = vmatpush2.msra.mxu0 0.0
  %3949 = vmatprep.subr.mxu0 0.0
  %3950 = vmatpush2.msra.mxu0 0.0
  %3951 = vmatprep.subr.mxu0 0.0
  %3952 = vmatpush2.msra.mxu0 0.0
  %3953 = vmatprep.subr.mxu0 0.0
  %3954 = vmatpush2.msra.mxu0 0.0
  %3955 = vmatprep.subr.mxu0 0.0
  %3956 = vmatpush2.msra.mxu0 0.0
  %3957 = vmatprep.subr.mxu0 0.0
  %3958 = vmatpush2.msra.mxu0 0.0
  %3959 = vmatprep.subr.mxu0 0.0
  %3960 = vmatpush2.msra.mxu0 0.0
  %3961 = vmatprep.subr.mxu0 0.0
  %3962 = vmatpush2.msra.mxu0 0.0
  %3963 = vmatprep.subr.mxu0 0.0
  %3964 = vmatpush2.msra.mxu0 0.0
  %3965 = vmatprep.mubr.f32.mxu0 0.0
  %3966 = vmatmul.mubr.f32.gmra.mxu0 %v675
  %v3967 = vpop.f32.mrf.mxu0
  %v3968 = vadd.f32 0.0, %v3967
  %v3969 = vpop.f32.mrf.mxu0
  %3970 = vmatprep.mubr.f32.mxu0 0.0
  %3971 = vmatmul.mubr.f32.gmra.mxu0 %v676
  %v3972 = vpop.f32.mrf.mxu0
  %v3973 = vadd.f32 0.0, %v3972
  %v3974 = vpop.f32.mrf.mxu0
  %3975 = vmatprep.mubr.f32.mxu0 0.0
  %3976 = vmatmul.mubr.f32.gmra.mxu0 %v677
  %v3977 = vpop.f32.mrf.mxu0
  %v3978 = vadd.f32 0.0, %v3977
  %v3979 = vpop.f32.mrf.mxu0
  %3980 = vmatprep.mubr.f32.mxu0 0.0
  %3981 = vmatmul.mubr.f32.gmra.mxu0 %v678
  %v3982 = vpop.f32.mrf.mxu0
  %v3983 = vadd.f32 0.0, %v3982
  %v3984 = vpop.f32.mrf.mxu0
  %3985 = vmatprep.mubr.f32.mxu0 0.0
  %3986 = vmatmul.mubr.f32.gmra.mxu0 %v679
  %v3987 = vpop.f32.mrf.mxu0
  %v3988 = vadd.f32 0.0, %v3987
  %v3989 = vpop.f32.mrf.mxu0
  %3990 = vmatprep.mubr.f32.mxu0 0.0
  %3991 = vmatmul.mubr.f32.gmra.mxu0 %v680
  %v3992 = vpop.f32.mrf.mxu0
  %v3993 = vadd.f32 0.0, %v3992
  %v3994 = vpop.f32.mrf.mxu0
  %3995 = vmatprep.mubr.f32.mxu0 0.0
  %3996 = vmatmul.mubr.f32.gmra.mxu0 %v681
  %v3997 = vpop.f32.mrf.mxu0
  %v3998 = vadd.f32 0.0, %v3997
  %v3999 = vpop.f32.mrf.mxu0
  %4000 = vmatprep.mubr.f32.mxu0 0.0
  %4001 = vmatmul.mubr.f32.gmra.mxu0 %v682
  %v4002 = vpop.f32.mrf.mxu0
  %v4003 = vadd.f32 0.0, %v4002
  %v4004 = vpop.f32.mrf.mxu0
  %4005 = vmatprep.mubr.f32.mxu0 0.0
  %4006 = vmatmul.mubr.f32.gmra.mxu0 %v683
  %v4007 = vpop.f32.mrf.mxu0
  %v4008 = vadd.f32 0.0, %v4007
  %v4009 = vpop.f32.mrf.mxu0
  %4010 = vmatprep.mubr.f32.mxu0 0.0
  %4011 = vmatmul.mubr.f32.gmra.mxu0 %v684
  %v4012 = vpop.f32.mrf.mxu0
  %v4013 = vadd.f32 0.0, %v4012
  %v4014 = vpop.f32.mrf.mxu0
  %4015 = vmatprep.mubr.f32.mxu0 0.0
  %4016 = vmatmul.mubr.f32.gmra.mxu0 %v685
  %v4017 = vpop.f32.mrf.mxu0
  %v4018 = vadd.f32 0.0, %v4017
  %v4019 = vpop.f32.mrf.mxu0
  %4020 = vmatprep.mubr.f32.mxu0 0.0
  %4021 = vmatmul.mubr.f32.gmra.mxu0 %v686
  %v4022 = vpop.f32.mrf.mxu0
  %v4023 = vadd.f32 0.0, %v4022
  %v4024 = vpop.f32.mrf.mxu0
  %4025 = vmatprep.mubr.f32.mxu0 0.0
  %4026 = vmatmul.mubr.f32.gmra.mxu0 %v687
  %v4027 = vpop.f32.mrf.mxu0
  %v4028 = vadd.f32 0.0, %v4027
  %v4029 = vpop.f32.mrf.mxu0
  %4030 = vmatprep.mubr.f32.mxu0 0.0
  %4031 = vmatmul.mubr.f32.gmra.mxu0 %v688
  %v4032 = vpop.f32.mrf.mxu0
  %v4033 = vadd.f32 0.0, %v4032
  %v4034 = vpop.f32.mrf.mxu0
  %4035 = vmatprep.mubr.f32.mxu0 0.0
  %4036 = vmatmul.mubr.f32.gmra.mxu0 %v689
  %v4037 = vpop.f32.mrf.mxu0
  %v4038 = vadd.f32 0.0, %v4037
  %v4039 = vpop.f32.mrf.mxu0
  %4040 = vmatprep.mubr.f32.mxu0 0.0
  %4041 = vmatmul.mubr.f32.gmra.mxu0 %v690
  %v4042 = vpop.f32.mrf.mxu0
  %v4043 = vadd.f32 0.0, %v4042
  %v4044 = vpop.f32.mrf.mxu0
  %4045 = vdwg.mxu0
  %s4046 = scalar_lea.vmem %s6, 32
  %v4047 = vld [vmem:[%s4046] sm:$0xff]
  %v4048 = vld [vmem:[%s4046 + $0x8] sm:$0xff]
  %v4049 = vld [vmem:[%s4046 + $0x10] sm:$0xff]
  %v4050 = vld [vmem:[%s4046 + $0x18] sm:$0xff]
  %v4052 = vsel %vm458, %v3968, 0
  %v4055 = vsel %vm458, %v3973, 0
  %v4058 = vsel %vm458, %v3978, 0
  %v4061 = vsel %vm458, %v3983, 0
  %v4064 = vsel %vm458, %v3988, 0
  %v4067 = vsel %vm458, %v3993, 0
  %v4070 = vsel %vm458, %v3998, 0
  %v4073 = vsel %vm458, %v4003, 0
  %v4076 = vsel %vm458, %v4008, 0
  %v4079 = vsel %vm458, %v4013, 0
  %v4082 = vsel %vm458, %v4018, 0
  %v4085 = vsel %vm458, %v4023, 0
  %v4088 = vsel %vm458, %v4028, 0
  %v4091 = vsel %vm458, %v4033, 0
  %v4094 = vsel %vm458, %v4038, 0
  %v4097 = vsel %vm458, %v4043, 0
  %4099 = vmatprep.subr.mxu0 0.0
  %4100 = vmatpush1.msra.mxu0 0.0
  %4101 = vmatprep.subr.mxu0 0.0
  %4102 = vmatpush1.msra.mxu0 0.0
  %4103 = vmatprep.subr.mxu0 0.0
  %4104 = vmatpush1.msra.mxu0 0.0
  %4105 = vmatprep.subr.mxu0 0.0
  %4106 = vmatpush1.msra.mxu0 0.0
  %4107 = vmatprep.subr.mxu0 0.0
  %4108 = vmatpush1.msra.mxu0 0.0
  %4109 = vmatprep.subr.mxu0 0.0
  %4110 = vmatpush1.msra.mxu0 0.0
  %4111 = vmatprep.subr.mxu0 0.0
  %4112 = vmatpush1.msra.mxu0 0.0
  %4113 = vmatprep.subr.mxu0 0.0
  %4114 = vmatpush1.msra.mxu0 0.0
  %4115 = vmatprep.subr.mxu0 0.0
  %4116 = vmatpush1.msra.mxu0 0.0
  %4117 = vmatprep.subr.mxu0 0.0
  %4118 = vmatpush1.msra.mxu0 0.0
  %4119 = vmatprep.subr.mxu0 0.0
  %4120 = vmatpush1.msra.mxu0 0.0
  %4121 = vmatprep.subr.mxu0 0.0
  %4122 = vmatpush1.msra.mxu0 0.0
  %4123 = vmatprep.subr.mxu0 0.0
  %4124 = vmatpush1.msra.mxu0 %v4050
  %4125 = vmatprep.subr.mxu0 0.0
  %4126 = vmatpush1.msra.mxu0 %v4049
  %4127 = vmatprep.subr.mxu0 0.0
  %4128 = vmatpush1.msra.mxu0 %v4048
  %4129 = vmatprep.subr.mxu0 0.0
  %4130 = vmatpush1.msra.mxu0 %v4047
  %4131 = vmatprep.subr.mxu0 0.0
  %4132 = vmatpush2.msra.mxu0 0.0
  %4133 = vmatprep.subr.mxu0 0.0
  %4134 = vmatpush2.msra.mxu0 0.0
  %4135 = vmatprep.subr.mxu0 0.0
  %4136 = vmatpush2.msra.mxu0 0.0
  %4137 = vmatprep.subr.mxu0 0.0
  %4138 = vmatpush2.msra.mxu0 0.0
  %4139 = vmatprep.subr.mxu0 0.0
  %4140 = vmatpush2.msra.mxu0 0.0
  %4141 = vmatprep.subr.mxu0 0.0
  %4142 = vmatpush2.msra.mxu0 0.0
  %4143 = vmatprep.subr.mxu0 0.0
  %4144 = vmatpush2.msra.mxu0 0.0
  %4145 = vmatprep.subr.mxu0 0.0
  %4146 = vmatpush2.msra.mxu0 0.0
  %4147 = vmatprep.subr.mxu0 0.0
  %4148 = vmatpush2.msra.mxu0 0.0
  %4149 = vmatprep.subr.mxu0 0.0
  %4150 = vmatpush2.msra.mxu0 0.0
  %4151 = vmatprep.subr.mxu0 0.0
  %4152 = vmatpush2.msra.mxu0 0.0
  %4153 = vmatprep.subr.mxu0 0.0
  %4154 = vmatpush2.msra.mxu0 0.0
  %4155 = vmatprep.subr.mxu0 0.0
  %4156 = vmatpush2.msra.mxu0 0.0
  %4157 = vmatprep.subr.mxu0 0.0
  %4158 = vmatpush2.msra.mxu0 0.0
  %4159 = vmatprep.subr.mxu0 0.0
  %4160 = vmatpush2.msra.mxu0 0.0
  %4161 = vmatprep.subr.mxu0 0.0
  %4162 = vmatpush2.msra.mxu0 0.0
  %4163 = vmatprep.mubr.f32.mxu0 0.0
  %4164 = vmatmul.mubr.f32.gmra.mxu0 %v4052
  %v4165 = vpop.f32.mrf.mxu0
  %v4166 = vadd.f32 0.0, %v4165
  %v4167 = vpop.f32.mrf.mxu0
  %4168 = vmatprep.mubr.f32.mxu0 0.0
  %4169 = vmatmul.mubr.f32.gmra.mxu0 %v4055
  %v4170 = vpop.f32.mrf.mxu0
  %v4171 = vadd.f32 0.0, %v4170
  %v4172 = vpop.f32.mrf.mxu0
  %4173 = vmatprep.mubr.f32.mxu0 0.0
  %4174 = vmatmul.mubr.f32.gmra.mxu0 %v4058
  %v4175 = vpop.f32.mrf.mxu0
  %v4176 = vadd.f32 0.0, %v4175
  %v4177 = vpop.f32.mrf.mxu0
  %4178 = vmatprep.mubr.f32.mxu0 0.0
  %4179 = vmatmul.mubr.f32.gmra.mxu0 %v4061
  %v4180 = vpop.f32.mrf.mxu0
  %v4181 = vadd.f32 0.0, %v4180
  %v4182 = vpop.f32.mrf.mxu0
  %4183 = vmatprep.mubr.f32.mxu0 0.0
  %4184 = vmatmul.mubr.f32.gmra.mxu0 %v4064
  %v4185 = vpop.f32.mrf.mxu0
  %v4186 = vadd.f32 0.0, %v4185
  %v4187 = vpop.f32.mrf.mxu0
  %4188 = vmatprep.mubr.f32.mxu0 0.0
  %4189 = vmatmul.mubr.f32.gmra.mxu0 %v4067
  %v4190 = vpop.f32.mrf.mxu0
  %v4191 = vadd.f32 0.0, %v4190
  %v4192 = vpop.f32.mrf.mxu0
  %4193 = vmatprep.mubr.f32.mxu0 0.0
  %4194 = vmatmul.mubr.f32.gmra.mxu0 %v4070
  %v4195 = vpop.f32.mrf.mxu0
  %v4196 = vadd.f32 0.0, %v4195
  %v4197 = vpop.f32.mrf.mxu0
  %4198 = vmatprep.mubr.f32.mxu0 0.0
  %4199 = vmatmul.mubr.f32.gmra.mxu0 %v4073
  %v4200 = vpop.f32.mrf.mxu0
  %v4201 = vadd.f32 0.0, %v4200
  %v4202 = vpop.f32.mrf.mxu0
  %4203 = vmatprep.mubr.f32.mxu0 0.0
  %4204 = vmatmul.mubr.f32.gmra.mxu0 %v4076
  %v4205 = vpop.f32.mrf.mxu0
  %v4206 = vadd.f32 0.0, %v4205
  %v4207 = vpop.f32.mrf.mxu0
  %4208 = vmatprep.mubr.f32.mxu0 0.0
  %4209 = vmatmul.mubr.f32.gmra.mxu0 %v4079
  %v4210 = vpop.f32.mrf.mxu0
  %v4211 = vadd.f32 0.0, %v4210
  %v4212 = vpop.f32.mrf.mxu0
  %4213 = vmatprep.mubr.f32.mxu0 0.0
  %4214 = vmatmul.mubr.f32.gmra.mxu0 %v4082
  %v4215 = vpop.f32.mrf.mxu0
  %v4216 = vadd.f32 0.0, %v4215
  %v4217 = vpop.f32.mrf.mxu0
  %4218 = vmatprep.mubr.f32.mxu0 0.0
  %4219 = vmatmul.mubr.f32.gmra.mxu0 %v4085
  %v4220 = vpop.f32.mrf.mxu0
  %v4221 = vadd.f32 0.0, %v4220
  %v4222 = vpop.f32.mrf.mxu0
  %4223 = vmatprep.mubr.f32.mxu0 0.0
  %4224 = vmatmul.mubr.f32.gmra.mxu0 %v4088
  %v4225 = vpop.f32.mrf.mxu0
  %v4226 = vadd.f32 0.0, %v4225
  %v4227 = vpop.f32.mrf.mxu0
  %4228 = vmatprep.mubr.f32.mxu0 0.0
  %4229 = vmatmul.mubr.f32.gmra.mxu0 %v4091
  %v4230 = vpop.f32.mrf.mxu0
  %v4231 = vadd.f32 0.0, %v4230
  %v4232 = vpop.f32.mrf.mxu0
  %4233 = vmatprep.mubr.f32.mxu0 0.0
  %4234 = vmatmul.mubr.f32.gmra.mxu0 %v4094
  %v4235 = vpop.f32.mrf.mxu0
  %v4236 = vadd.f32 0.0, %v4235
  %v4237 = vpop.f32.mrf.mxu0
  %4238 = vmatprep.mubr.f32.mxu0 0.0
  %4239 = vmatmul.mubr.f32.gmra.mxu0 %v4097
  %v4240 = vpop.f32.mrf.mxu0
  %v4241 = vadd.f32 0.0, %v4240
  %v4242 = vpop.f32.mrf.mxu0
  %4243 = vdwg.mxu0
  %v4244 = vadd.f32 %v3885, %v4166
  %v4245 = vadd.f32 %v3886, %v4171
  %v4246 = vadd.f32 %v3887, %v4176
  %v4247 = vadd.f32 %v3888, %v4181
  %v4248 = vadd.f32 %v3889, %v4186
  %v4249 = vadd.f32 %v3890, %v4191
  %v4250 = vadd.f32 %v3891, %v4196
  %v4251 = vadd.f32 %v3892, %v4201
  %v4252 = vadd.f32 %v3893, %v4206
  %v4253 = vadd.f32 %v3894, %v4211
  %v4254 = vadd.f32 %v3895, %v4216
  %v4255 = vadd.f32 %v3896, %v4221
  %v4256 = vadd.f32 %v3897, %v4226
  %v4257 = vadd.f32 %v3898, %v4231
  %v4258 = vadd.f32 %v3899, %v4236
  %v4259 = vadd.f32 %v3900, %v4241
  %4260 = vmatprep.subr.mxu0 0.0
  %4261 = vmatpush1.msra.mxu0 %v3535
  %4262 = vmatprep.subr.mxu0 0.0
  %4263 = vmatpush1.msra.mxu0 %v3534
  %4264 = vmatprep.subr.mxu0 0.0
  %4265 = vmatpush1.msra.mxu0 %v3533
  %4266 = vmatprep.subr.mxu0 0.0
  %4267 = vmatpush1.msra.mxu0 %v3532
  %4268 = vmatprep.subr.mxu0 0.0
  %4269 = vmatpush1.msra.mxu0 %v3531
  %4270 = vmatprep.subr.mxu0 0.0
  %4271 = vmatpush1.msra.mxu0 %v3530
  %4272 = vmatprep.subr.mxu0 0.0
  %4273 = vmatpush1.msra.mxu0 %v3529
  %4274 = vmatprep.subr.mxu0 0.0
  %4275 = vmatpush1.msra.mxu0 %v3528
  %4276 = vmatprep.subr.mxu0 0.0
  %4277 = vmatpush1.msra.mxu0 %v3527
  %4278 = vmatprep.subr.mxu0 0.0
  %4279 = vmatpush1.msra.mxu0 %v3526
  %4280 = vmatprep.subr.mxu0 0.0
  %4281 = vmatpush1.msra.mxu0 %v3525
  %4282 = vmatprep.subr.mxu0 0.0
  %4283 = vmatpush1.msra.mxu0 %v3524
  %4284 = vmatprep.subr.mxu0 0.0
  %4285 = vmatpush1.msra.mxu0 %v3523
  %4286 = vmatprep.subr.mxu0 0.0
  %4287 = vmatpush1.msra.mxu0 %v3522
  %4288 = vmatprep.subr.mxu0 0.0
  %4289 = vmatpush1.msra.mxu0 %v3521
  %4290 = vmatprep.subr.mxu0 0.0
  %4291 = vmatpush1.msra.mxu0 %v3520
  %4292 = vmatprep.subr.mxu0 0.0
  %4293 = vmatpush2.msra.mxu0 0.0
  %4294 = vmatprep.subr.mxu0 0.0
  %4295 = vmatpush2.msra.mxu0 0.0
  %4296 = vmatprep.subr.mxu0 0.0
  %4297 = vmatpush2.msra.mxu0 0.0
  %4298 = vmatprep.subr.mxu0 0.0
  %4299 = vmatpush2.msra.mxu0 0.0
  %4300 = vmatprep.subr.mxu0 0.0
  %4301 = vmatpush2.msra.mxu0 0.0
  %4302 = vmatprep.subr.mxu0 0.0
  %4303 = vmatpush2.msra.mxu0 0.0
  %4304 = vmatprep.subr.mxu0 0.0
  %4305 = vmatpush2.msra.mxu0 0.0
  %4306 = vmatprep.subr.mxu0 0.0
  %4307 = vmatpush2.msra.mxu0 0.0
  %4308 = vmatprep.subr.mxu0 0.0
  %4309 = vmatpush2.msra.mxu0 0.0
  %4310 = vmatprep.subr.mxu0 0.0
  %4311 = vmatpush2.msra.mxu0 0.0
  %4312 = vmatprep.subr.mxu0 0.0
  %4313 = vmatpush2.msra.mxu0 0.0
  %4314 = vmatprep.subr.mxu0 0.0
  %4315 = vmatpush2.msra.mxu0 0.0
  %4316 = vmatprep.subr.mxu0 0.0
  %4317 = vmatpush2.msra.mxu0 0.0
  %4318 = vmatprep.subr.mxu0 0.0
  %4319 = vmatpush2.msra.mxu0 0.0
  %4320 = vmatprep.subr.mxu0 0.0
  %4321 = vmatpush2.msra.mxu0 0.0
  %4322 = vmatprep.subr.mxu0 0.0
  %4323 = vmatpush2.msra.mxu0 0.0
  %4324 = vmatprep.mubr.f32.mxu0 0.0
  %4325 = vmatmul.mubr.f32.gmra.mxu0 %v1051
  %v4326 = vpop.f32.mrf.mxu0
  %v4327 = vadd.f32 0.0, %v4326
  %v4328 = vpop.f32.mrf.mxu0
  %4329 = vmatprep.mubr.f32.mxu0 0.0
  %4330 = vmatmul.mubr.f32.gmra.mxu0 %v1052
  %v4331 = vpop.f32.mrf.mxu0
  %v4332 = vadd.f32 0.0, %v4331
  %v4333 = vpop.f32.mrf.mxu0
  %4334 = vmatprep.mubr.f32.mxu0 0.0
  %4335 = vmatmul.mubr.f32.gmra.mxu0 %v1053
  %v4336 = vpop.f32.mrf.mxu0
  %v4337 = vadd.f32 0.0, %v4336
  %v4338 = vpop.f32.mrf.mxu0
  %4339 = vmatprep.mubr.f32.mxu0 0.0
  %4340 = vmatmul.mubr.f32.gmra.mxu0 %v1054
  %v4341 = vpop.f32.mrf.mxu0
  %v4342 = vadd.f32 0.0, %v4341
  %v4343 = vpop.f32.mrf.mxu0
  %4344 = vmatprep.mubr.f32.mxu0 0.0
  %4345 = vmatmul.mubr.f32.gmra.mxu0 %v1055
  %v4346 = vpop.f32.mrf.mxu0
  %v4347 = vadd.f32 0.0, %v4346
  %v4348 = vpop.f32.mrf.mxu0
  %4349 = vmatprep.mubr.f32.mxu0 0.0
  %4350 = vmatmul.mubr.f32.gmra.mxu0 %v1056
  %v4351 = vpop.f32.mrf.mxu0
  %v4352 = vadd.f32 0.0, %v4351
  %v4353 = vpop.f32.mrf.mxu0
  %4354 = vmatprep.mubr.f32.mxu0 0.0
  %4355 = vmatmul.mubr.f32.gmra.mxu0 %v1057
  %v4356 = vpop.f32.mrf.mxu0
  %v4357 = vadd.f32 0.0, %v4356
  %v4358 = vpop.f32.mrf.mxu0
  %4359 = vmatprep.mubr.f32.mxu0 0.0
  %4360 = vmatmul.mubr.f32.gmra.mxu0 %v1058
  %v4361 = vpop.f32.mrf.mxu0
  %v4362 = vadd.f32 0.0, %v4361
  %v4363 = vpop.f32.mrf.mxu0
  %4364 = vmatprep.mubr.f32.mxu0 0.0
  %4365 = vmatmul.mubr.f32.gmra.mxu0 %v1059
  %v4366 = vpop.f32.mrf.mxu0
  %v4367 = vadd.f32 0.0, %v4366
  %v4368 = vpop.f32.mrf.mxu0
  %4369 = vmatprep.mubr.f32.mxu0 0.0
  %4370 = vmatmul.mubr.f32.gmra.mxu0 %v1060
  %v4371 = vpop.f32.mrf.mxu0
  %v4372 = vadd.f32 0.0, %v4371
  %v4373 = vpop.f32.mrf.mxu0
  %4374 = vmatprep.mubr.f32.mxu0 0.0
  %4375 = vmatmul.mubr.f32.gmra.mxu0 %v1061
  %v4376 = vpop.f32.mrf.mxu0
  %v4377 = vadd.f32 0.0, %v4376
  %v4378 = vpop.f32.mrf.mxu0
  %4379 = vmatprep.mubr.f32.mxu0 0.0
  %4380 = vmatmul.mubr.f32.gmra.mxu0 %v1062
  %v4381 = vpop.f32.mrf.mxu0
  %v4382 = vadd.f32 0.0, %v4381
  %v4383 = vpop.f32.mrf.mxu0
  %4384 = vmatprep.mubr.f32.mxu0 0.0
  %4385 = vmatmul.mubr.f32.gmra.mxu0 %v1063
  %v4386 = vpop.f32.mrf.mxu0
  %v4387 = vadd.f32 0.0, %v4386
  %v4388 = vpop.f32.mrf.mxu0
  %4389 = vmatprep.mubr.f32.mxu0 0.0
  %4390 = vmatmul.mubr.f32.gmra.mxu0 %v1064
  %v4391 = vpop.f32.mrf.mxu0
  %v4392 = vadd.f32 0.0, %v4391
  %v4393 = vpop.f32.mrf.mxu0
  %4394 = vmatprep.mubr.f32.mxu0 0.0
  %4395 = vmatmul.mubr.f32.gmra.mxu0 %v1065
  %v4396 = vpop.f32.mrf.mxu0
  %v4397 = vadd.f32 0.0, %v4396
  %v4398 = vpop.f32.mrf.mxu0
  %4399 = vmatprep.mubr.f32.mxu0 0.0
  %4400 = vmatmul.mubr.f32.gmra.mxu0 %v1066
  %v4401 = vpop.f32.mrf.mxu0
  %v4402 = vadd.f32 0.0, %v4401
  %v4403 = vpop.f32.mrf.mxu0
  %4404 = vdwg.mxu0
  %s4405 = scalar_lea.vmem %s6, 64
  %v4406 = vld [vmem:[%s4405] sm:$0xff]
  %v4407 = vld [vmem:[%s4405 + $0x8] sm:$0xff]
  %v4408 = vld [vmem:[%s4405 + $0x10] sm:$0xff]
  %v4409 = vld [vmem:[%s4405 + $0x18] sm:$0xff]
  %v4411 = vsel %vm458, %v4327, 0
  %v4414 = vsel %vm458, %v4332, 0
  %v4417 = vsel %vm458, %v4337, 0
  %v4420 = vsel %vm458, %v4342, 0
  %v4423 = vsel %vm458, %v4347, 0
  %v4426 = vsel %vm458, %v4352, 0
  %v4429 = vsel %vm458, %v4357, 0
  %v4432 = vsel %vm458, %v4362, 0
  %v4435 = vsel %vm458, %v4367, 0
  %v4438 = vsel %vm458, %v4372, 0
  %v4441 = vsel %vm458, %v4377, 0
  %v4444 = vsel %vm458, %v4382, 0
  %v4447 = vsel %vm458, %v4387, 0
  %v4450 = vsel %vm458, %v4392, 0
  %v4453 = vsel %vm458, %v4397, 0
  %v4456 = vsel %vm458, %v4402, 0
  %4458 = vmatprep.subr.mxu0 0.0
  %4459 = vmatpush1.msra.mxu0 0.0
  %4460 = vmatprep.subr.mxu0 0.0
  %4461 = vmatpush1.msra.mxu0 0.0
  %4462 = vmatprep.subr.mxu0 0.0
  %4463 = vmatpush1.msra.mxu0 0.0
  %4464 = vmatprep.subr.mxu0 0.0
  %4465 = vmatpush1.msra.mxu0 0.0
  %4466 = vmatprep.subr.mxu0 0.0
  %4467 = vmatpush1.msra.mxu0 0.0
  %4468 = vmatprep.subr.mxu0 0.0
  %4469 = vmatpush1.msra.mxu0 0.0
  %4470 = vmatprep.subr.mxu0 0.0
  %4471 = vmatpush1.msra.mxu0 0.0
  %4472 = vmatprep.subr.mxu0 0.0
  %4473 = vmatpush1.msra.mxu0 0.0
  %4474 = vmatprep.subr.mxu0 0.0
  %4475 = vmatpush1.msra.mxu0 0.0
  %4476 = vmatprep.subr.mxu0 0.0
  %4477 = vmatpush1.msra.mxu0 0.0
  %4478 = vmatprep.subr.mxu0 0.0
  %4479 = vmatpush1.msra.mxu0 0.0
  %4480 = vmatprep.subr.mxu0 0.0
  %4481 = vmatpush1.msra.mxu0 0.0
  %4482 = vmatprep.subr.mxu0 0.0
  %4483 = vmatpush1.msra.mxu0 %v4409
  %4484 = vmatprep.subr.mxu0 0.0
  %4485 = vmatpush1.msra.mxu0 %v4408
  %4486 = vmatprep.subr.mxu0 0.0
  %4487 = vmatpush1.msra.mxu0 %v4407
  %4488 = vmatprep.subr.mxu0 0.0
  %4489 = vmatpush1.msra.mxu0 %v4406
  %4490 = vmatprep.subr.mxu0 0.0
  %4491 = vmatpush2.msra.mxu0 0.0
  %4492 = vmatprep.subr.mxu0 0.0
  %4493 = vmatpush2.msra.mxu0 0.0
  %4494 = vmatprep.subr.mxu0 0.0
  %4495 = vmatpush2.msra.mxu0 0.0
  %4496 = vmatprep.subr.mxu0 0.0
  %4497 = vmatpush2.msra.mxu0 0.0
  %4498 = vmatprep.subr.mxu0 0.0
  %4499 = vmatpush2.msra.mxu0 0.0
  %4500 = vmatprep.subr.mxu0 0.0
  %4501 = vmatpush2.msra.mxu0 0.0
  %4502 = vmatprep.subr.mxu0 0.0
  %4503 = vmatpush2.msra.mxu0 0.0
  %4504 = vmatprep.subr.mxu0 0.0
  %4505 = vmatpush2.msra.mxu0 0.0
  %4506 = vmatprep.subr.mxu0 0.0
  %4507 = vmatpush2.msra.mxu0 0.0
  %4508 = vmatprep.subr.mxu0 0.0
  %4509 = vmatpush2.msra.mxu0 0.0
  %4510 = vmatprep.subr.mxu0 0.0
  %4511 = vmatpush2.msra.mxu0 0.0
  %4512 = vmatprep.subr.mxu0 0.0
  %4513 = vmatpush2.msra.mxu0 0.0
  %4514 = vmatprep.subr.mxu0 0.0
  %4515 = vmatpush2.msra.mxu0 0.0
  %4516 = vmatprep.subr.mxu0 0.0
  %4517 = vmatpush2.msra.mxu0 0.0
  %4518 = vmatprep.subr.mxu0 0.0
  %4519 = vmatpush2.msra.mxu0 0.0
  %4520 = vmatprep.subr.mxu0 0.0
  %4521 = vmatpush2.msra.mxu0 0.0
  %4522 = vmatprep.mubr.f32.mxu0 0.0
  %4523 = vmatmul.mubr.f32.gmra.mxu0 %v4411
  %v4524 = vpop.f32.mrf.mxu0
  %v4525 = vadd.f32 0.0, %v4524
  %v4526 = vpop.f32.mrf.mxu0
  %4527 = vmatprep.mubr.f32.mxu0 0.0
  %4528 = vmatmul.mubr.f32.gmra.mxu0 %v4414
  %v4529 = vpop.f32.mrf.mxu0
  %v4530 = vadd.f32 0.0, %v4529
  %v4531 = vpop.f32.mrf.mxu0
  %4532 = vmatprep.mubr.f32.mxu0 0.0
  %4533 = vmatmul.mubr.f32.gmra.mxu0 %v4417
  %v4534 = vpop.f32.mrf.mxu0
  %v4535 = vadd.f32 0.0, %v4534
  %v4536 = vpop.f32.mrf.mxu0
  %4537 = vmatprep.mubr.f32.mxu0 0.0
  %4538 = vmatmul.mubr.f32.gmra.mxu0 %v4420
  %v4539 = vpop.f32.mrf.mxu0
  %v4540 = vadd.f32 0.0, %v4539
  %v4541 = vpop.f32.mrf.mxu0
  %4542 = vmatprep.mubr.f32.mxu0 0.0
  %4543 = vmatmul.mubr.f32.gmra.mxu0 %v4423
  %v4544 = vpop.f32.mrf.mxu0
  %v4545 = vadd.f32 0.0, %v4544
  %v4546 = vpop.f32.mrf.mxu0
  %4547 = vmatprep.mubr.f32.mxu0 0.0
  %4548 = vmatmul.mubr.f32.gmra.mxu0 %v4426
  %v4549 = vpop.f32.mrf.mxu0
  %v4550 = vadd.f32 0.0, %v4549
  %v4551 = vpop.f32.mrf.mxu0
  %4552 = vmatprep.mubr.f32.mxu0 0.0
  %4553 = vmatmul.mubr.f32.gmra.mxu0 %v4429
  %v4554 = vpop.f32.mrf.mxu0
  %v4555 = vadd.f32 0.0, %v4554
  %v4556 = vpop.f32.mrf.mxu0
  %4557 = vmatprep.mubr.f32.mxu0 0.0
  %4558 = vmatmul.mubr.f32.gmra.mxu0 %v4432
  %v4559 = vpop.f32.mrf.mxu0
  %v4560 = vadd.f32 0.0, %v4559
  %v4561 = vpop.f32.mrf.mxu0
  %4562 = vmatprep.mubr.f32.mxu0 0.0
  %4563 = vmatmul.mubr.f32.gmra.mxu0 %v4435
  %v4564 = vpop.f32.mrf.mxu0
  %v4565 = vadd.f32 0.0, %v4564
  %v4566 = vpop.f32.mrf.mxu0
  %4567 = vmatprep.mubr.f32.mxu0 0.0
  %4568 = vmatmul.mubr.f32.gmra.mxu0 %v4438
  %v4569 = vpop.f32.mrf.mxu0
  %v4570 = vadd.f32 0.0, %v4569
  %v4571 = vpop.f32.mrf.mxu0
  %4572 = vmatprep.mubr.f32.mxu0 0.0
  %4573 = vmatmul.mubr.f32.gmra.mxu0 %v4441
  %v4574 = vpop.f32.mrf.mxu0
  %v4575 = vadd.f32 0.0, %v4574
  %v4576 = vpop.f32.mrf.mxu0
  %4577 = vmatprep.mubr.f32.mxu0 0.0
  %4578 = vmatmul.mubr.f32.gmra.mxu0 %v4444
  %v4579 = vpop.f32.mrf.mxu0
  %v4580 = vadd.f32 0.0, %v4579
  %v4581 = vpop.f32.mrf.mxu0
  %4582 = vmatprep.mubr.f32.mxu0 0.0
  %4583 = vmatmul.mubr.f32.gmra.mxu0 %v4447
  %v4584 = vpop.f32.mrf.mxu0
  %v4585 = vadd.f32 0.0, %v4584
  %v4586 = vpop.f32.mrf.mxu0
  %4587 = vmatprep.mubr.f32.mxu0 0.0
  %4588 = vmatmul.mubr.f32.gmra.mxu0 %v4450
  %v4589 = vpop.f32.mrf.mxu0
  %v4590 = vadd.f32 0.0, %v4589
  %v4591 = vpop.f32.mrf.mxu0
  %4592 = vmatprep.mubr.f32.mxu0 0.0
  %4593 = vmatmul.mubr.f32.gmra.mxu0 %v4453
  %v4594 = vpop.f32.mrf.mxu0
  %v4595 = vadd.f32 0.0, %v4594
  %v4596 = vpop.f32.mrf.mxu0
  %4597 = vmatprep.mubr.f32.mxu0 0.0
  %4598 = vmatmul.mubr.f32.gmra.mxu0 %v4456
  %v4599 = vpop.f32.mrf.mxu0
  %v4600 = vadd.f32 0.0, %v4599
  %v4601 = vpop.f32.mrf.mxu0
  %4602 = vdwg.mxu0
  %v4603 = vadd.f32 %v4244, %v4525
  %v4604 = vadd.f32 %v4245, %v4530
  %v4605 = vadd.f32 %v4246, %v4535
  %v4606 = vadd.f32 %v4247, %v4540
  %v4607 = vadd.f32 %v4248, %v4545
  %v4608 = vadd.f32 %v4249, %v4550
  %v4609 = vadd.f32 %v4250, %v4555
  %v4610 = vadd.f32 %v4251, %v4560
  %v4611 = vadd.f32 %v4252, %v4565
  %v4612 = vadd.f32 %v4253, %v4570
  %v4613 = vadd.f32 %v4254, %v4575
  %v4614 = vadd.f32 %v4255, %v4580
  %v4615 = vadd.f32 %v4256, %v4585
  %v4616 = vadd.f32 %v4257, %v4590
  %v4617 = vadd.f32 %v4258, %v4595
  %v4618 = vadd.f32 %v4259, %v4600
  %4619 = vmatprep.subr.mxu0 0.0
  %4620 = vmatpush1.msra.mxu0 %v3535
  %4621 = vmatprep.subr.mxu0 0.0
  %4622 = vmatpush1.msra.mxu0 %v3534
  %4623 = vmatprep.subr.mxu0 0.0
  %4624 = vmatpush1.msra.mxu0 %v3533
  %4625 = vmatprep.subr.mxu0 0.0
  %4626 = vmatpush1.msra.mxu0 %v3532
  %4627 = vmatprep.subr.mxu0 0.0
  %4628 = vmatpush1.msra.mxu0 %v3531
  %4629 = vmatprep.subr.mxu0 0.0
  %4630 = vmatpush1.msra.mxu0 %v3530
  %4631 = vmatprep.subr.mxu0 0.0
  %4632 = vmatpush1.msra.mxu0 %v3529
  %4633 = vmatprep.subr.mxu0 0.0
  %4634 = vmatpush1.msra.mxu0 %v3528
  %4635 = vmatprep.subr.mxu0 0.0
  %4636 = vmatpush1.msra.mxu0 %v3527
  %4637 = vmatprep.subr.mxu0 0.0
  %4638 = vmatpush1.msra.mxu0 %v3526
  %4639 = vmatprep.subr.mxu0 0.0
  %4640 = vmatpush1.msra.mxu0 %v3525
  %4641 = vmatprep.subr.mxu0 0.0
  %4642 = vmatpush1.msra.mxu0 %v3524
  %4643 = vmatprep.subr.mxu0 0.0
  %4644 = vmatpush1.msra.mxu0 %v3523
  %4645 = vmatprep.subr.mxu0 0.0
  %4646 = vmatpush1.msra.mxu0 %v3522
  %4647 = vmatprep.subr.mxu0 0.0
  %4648 = vmatpush1.msra.mxu0 %v3521
  %4649 = vmatprep.subr.mxu0 0.0
  %4650 = vmatpush1.msra.mxu0 %v3520
  %4651 = vmatprep.subr.mxu0 0.0
  %4652 = vmatpush2.msra.mxu0 0.0
  %4653 = vmatprep.subr.mxu0 0.0
  %4654 = vmatpush2.msra.mxu0 0.0
  %4655 = vmatprep.subr.mxu0 0.0
  %4656 = vmatpush2.msra.mxu0 0.0
  %4657 = vmatprep.subr.mxu0 0.0
  %4658 = vmatpush2.msra.mxu0 0.0
  %4659 = vmatprep.subr.mxu0 0.0
  %4660 = vmatpush2.msra.mxu0 0.0
  %4661 = vmatprep.subr.mxu0 0.0
  %4662 = vmatpush2.msra.mxu0 0.0
  %4663 = vmatprep.subr.mxu0 0.0
  %4664 = vmatpush2.msra.mxu0 0.0
  %4665 = vmatprep.subr.mxu0 0.0
  %4666 = vmatpush2.msra.mxu0 0.0
  %4667 = vmatprep.subr.mxu0 0.0
  %4668 = vmatpush2.msra.mxu0 0.0
  %4669 = vmatprep.subr.mxu0 0.0
  %4670 = vmatpush2.msra.mxu0 0.0
  %4671 = vmatprep.subr.mxu0 0.0
  %4672 = vmatpush2.msra.mxu0 0.0
  %4673 = vmatprep.subr.mxu0 0.0
  %4674 = vmatpush2.msra.mxu0 0.0
  %4675 = vmatprep.subr.mxu0 0.0
  %4676 = vmatpush2.msra.mxu0 0.0
  %4677 = vmatprep.subr.mxu0 0.0
  %4678 = vmatpush2.msra.mxu0 0.0
  %4679 = vmatprep.subr.mxu0 0.0
  %4680 = vmatpush2.msra.mxu0 0.0
  %4681 = vmatprep.subr.mxu0 0.0
  %4682 = vmatpush2.msra.mxu0 0.0
  %4683 = vmatprep.mubr.f32.mxu0 0.0
  %4684 = vmatmul.mubr.f32.gmra.mxu0 %v1427
  %v4685 = vpop.f32.mrf.mxu0
  %v4686 = vadd.f32 0.0, %v4685
  %v4687 = vpop.f32.mrf.mxu0
  %4688 = vmatprep.mubr.f32.mxu0 0.0
  %4689 = vmatmul.mubr.f32.gmra.mxu0 %v1428
  %v4690 = vpop.f32.mrf.mxu0
  %v4691 = vadd.f32 0.0, %v4690
  %v4692 = vpop.f32.mrf.mxu0
  %4693 = vmatprep.mubr.f32.mxu0 0.0
  %4694 = vmatmul.mubr.f32.gmra.mxu0 %v1429
  %v4695 = vpop.f32.mrf.mxu0
  %v4696 = vadd.f32 0.0, %v4695
  %v4697 = vpop.f32.mrf.mxu0
  %4698 = vmatprep.mubr.f32.mxu0 0.0
  %4699 = vmatmul.mubr.f32.gmra.mxu0 %v1430
  %v4700 = vpop.f32.mrf.mxu0
  %v4701 = vadd.f32 0.0, %v4700
  %v4702 = vpop.f32.mrf.mxu0
  %4703 = vmatprep.mubr.f32.mxu0 0.0
  %4704 = vmatmul.mubr.f32.gmra.mxu0 %v1431
  %v4705 = vpop.f32.mrf.mxu0
  %v4706 = vadd.f32 0.0, %v4705
  %v4707 = vpop.f32.mrf.mxu0
  %4708 = vmatprep.mubr.f32.mxu0 0.0
  %4709 = vmatmul.mubr.f32.gmra.mxu0 %v1432
  %v4710 = vpop.f32.mrf.mxu0
  %v4711 = vadd.f32 0.0, %v4710
  %v4712 = vpop.f32.mrf.mxu0
  %4713 = vmatprep.mubr.f32.mxu0 0.0
  %4714 = vmatmul.mubr.f32.gmra.mxu0 %v1433
  %v4715 = vpop.f32.mrf.mxu0
  %v4716 = vadd.f32 0.0, %v4715
  %v4717 = vpop.f32.mrf.mxu0
  %4718 = vmatprep.mubr.f32.mxu0 0.0
  %4719 = vmatmul.mubr.f32.gmra.mxu0 %v1434
  %v4720 = vpop.f32.mrf.mxu0
  %v4721 = vadd.f32 0.0, %v4720
  %v4722 = vpop.f32.mrf.mxu0
  %4723 = vmatprep.mubr.f32.mxu0 0.0
  %4724 = vmatmul.mubr.f32.gmra.mxu0 %v1435
  %v4725 = vpop.f32.mrf.mxu0
  %v4726 = vadd.f32 0.0, %v4725
  %v4727 = vpop.f32.mrf.mxu0
  %4728 = vmatprep.mubr.f32.mxu0 0.0
  %4729 = vmatmul.mubr.f32.gmra.mxu0 %v1436
  %v4730 = vpop.f32.mrf.mxu0
  %v4731 = vadd.f32 0.0, %v4730
  %v4732 = vpop.f32.mrf.mxu0
  %4733 = vmatprep.mubr.f32.mxu0 0.0
  %4734 = vmatmul.mubr.f32.gmra.mxu0 %v1437
  %v4735 = vpop.f32.mrf.mxu0
  %v4736 = vadd.f32 0.0, %v4735
  %v4737 = vpop.f32.mrf.mxu0
  %4738 = vmatprep.mubr.f32.mxu0 0.0
  %4739 = vmatmul.mubr.f32.gmra.mxu0 %v1438
  %v4740 = vpop.f32.mrf.mxu0
  %v4741 = vadd.f32 0.0, %v4740
  %v4742 = vpop.f32.mrf.mxu0
  %4743 = vmatprep.mubr.f32.mxu0 0.0
  %4744 = vmatmul.mubr.f32.gmra.mxu0 %v1439
  %v4745 = vpop.f32.mrf.mxu0
  %v4746 = vadd.f32 0.0, %v4745
  %v4747 = vpop.f32.mrf.mxu0
  %4748 = vmatprep.mubr.f32.mxu0 0.0
  %4749 = vmatmul.mubr.f32.gmra.mxu0 %v1440
  %v4750 = vpop.f32.mrf.mxu0
  %v4751 = vadd.f32 0.0, %v4750
  %v4752 = vpop.f32.mrf.mxu0
  %4753 = vmatprep.mubr.f32.mxu0 0.0
  %4754 = vmatmul.mubr.f32.gmra.mxu0 %v1441
  %v4755 = vpop.f32.mrf.mxu0
  %v4756 = vadd.f32 0.0, %v4755
  %v4757 = vpop.f32.mrf.mxu0
  %4758 = vmatprep.mubr.f32.mxu0 0.0
  %4759 = vmatmul.mubr.f32.gmra.mxu0 %v1442
  %v4760 = vpop.f32.mrf.mxu0
  %v4761 = vadd.f32 0.0, %v4760
  %v4762 = vpop.f32.mrf.mxu0
  %4763 = vdwg.mxu0
  %s4764 = scalar_lea.vmem %s6, 96
  %v4765 = vld [vmem:[%s4764] sm:$0xff]
  %v4766 = vld [vmem:[%s4764 + $0x8] sm:$0xff]
  %v4767 = vld [vmem:[%s4764 + $0x10] sm:$0xff]
  %v4768 = vld [vmem:[%s4764 + $0x18] sm:$0xff]
  %v4770 = vsel %vm458, %v4686, 0
  %v4773 = vsel %vm458, %v4691, 0
  %v4776 = vsel %vm458, %v4696, 0
  %v4779 = vsel %vm458, %v4701, 0
  %v4782 = vsel %vm458, %v4706, 0
  %v4785 = vsel %vm458, %v4711, 0
  %v4788 = vsel %vm458, %v4716, 0
  %v4791 = vsel %vm458, %v4721, 0
  %v4794 = vsel %vm458, %v4726, 0
  %v4797 = vsel %vm458, %v4731, 0
  %v4800 = vsel %vm458, %v4736, 0
  %v4803 = vsel %vm458, %v4741, 0
  %v4806 = vsel %vm458, %v4746, 0
  %v4809 = vsel %vm458, %v4751, 0
  %v4812 = vsel %vm458, %v4756, 0
  %v4815 = vsel %vm458, %v4761, 0
  %4817 = vmatprep.subr.mxu0 0.0
  %4818 = vmatpush1.msra.mxu0 0.0
  %4819 = vmatprep.subr.mxu0 0.0
  %4820 = vmatpush1.msra.mxu0 0.0
  %4821 = vmatprep.subr.mxu0 0.0
  %4822 = vmatpush1.msra.mxu0 0.0
  %4823 = vmatprep.subr.mxu0 0.0
  %4824 = vmatpush1.msra.mxu0 0.0
  %4825 = vmatprep.subr.mxu0 0.0
  %4826 = vmatpush1.msra.mxu0 0.0
  %4827 = vmatprep.subr.mxu0 0.0
  %4828 = vmatpush1.msra.mxu0 0.0
  %4829 = vmatprep.subr.mxu0 0.0
  %4830 = vmatpush1.msra.mxu0 0.0
  %4831 = vmatprep.subr.mxu0 0.0
  %4832 = vmatpush1.msra.mxu0 0.0
  %4833 = vmatprep.subr.mxu0 0.0
  %4834 = vmatpush1.msra.mxu0 0.0
  %4835 = vmatprep.subr.mxu0 0.0
  %4836 = vmatpush1.msra.mxu0 0.0
  %4837 = vmatprep.subr.mxu0 0.0
  %4838 = vmatpush1.msra.mxu0 0.0
  %4839 = vmatprep.subr.mxu0 0.0
  %4840 = vmatpush1.msra.mxu0 0.0
  %4841 = vmatprep.subr.mxu0 0.0
  %4842 = vmatpush1.msra.mxu0 %v4768
  %4843 = vmatprep.subr.mxu0 0.0
  %4844 = vmatpush1.msra.mxu0 %v4767
  %4845 = vmatprep.subr.mxu0 0.0
  %4846 = vmatpush1.msra.mxu0 %v4766
  %4847 = vmatprep.subr.mxu0 0.0
  %4848 = vmatpush1.msra.mxu0 %v4765
  %4849 = vmatprep.subr.mxu0 0.0
  %4850 = vmatpush2.msra.mxu0 0.0
  %4851 = vmatprep.subr.mxu0 0.0
  %4852 = vmatpush2.msra.mxu0 0.0
  %4853 = vmatprep.subr.mxu0 0.0
  %4854 = vmatpush2.msra.mxu0 0.0
  %4855 = vmatprep.subr.mxu0 0.0
  %4856 = vmatpush2.msra.mxu0 0.0
  %4857 = vmatprep.subr.mxu0 0.0
  %4858 = vmatpush2.msra.mxu0 0.0
  %4859 = vmatprep.subr.mxu0 0.0
  %4860 = vmatpush2.msra.mxu0 0.0
  %4861 = vmatprep.subr.mxu0 0.0
  %4862 = vmatpush2.msra.mxu0 0.0
  %4863 = vmatprep.subr.mxu0 0.0
  %4864 = vmatpush2.msra.mxu0 0.0
  %4865 = vmatprep.subr.mxu0 0.0
  %4866 = vmatpush2.msra.mxu0 0.0
  %4867 = vmatprep.subr.mxu0 0.0
  %4868 = vmatpush2.msra.mxu0 0.0
  %4869 = vmatprep.subr.mxu0 0.0
  %4870 = vmatpush2.msra.mxu0 0.0
  %4871 = vmatprep.subr.mxu0 0.0
  %4872 = vmatpush2.msra.mxu0 0.0
  %4873 = vmatprep.subr.mxu0 0.0
  %4874 = vmatpush2.msra.mxu0 0.0
  %4875 = vmatprep.subr.mxu0 0.0
  %4876 = vmatpush2.msra.mxu0 0.0
  %4877 = vmatprep.subr.mxu0 0.0
  %4878 = vmatpush2.msra.mxu0 0.0
  %4879 = vmatprep.subr.mxu0 0.0
  %4880 = vmatpush2.msra.mxu0 0.0
  %4881 = vmatprep.mubr.f32.mxu0 0.0
  %4882 = vmatmul.mubr.f32.gmra.mxu0 %v4770
  %v4883 = vpop.f32.mrf.mxu0
  %v4884 = vadd.f32 0.0, %v4883
  %v4885 = vpop.f32.mrf.mxu0
  %4886 = vmatprep.mubr.f32.mxu0 0.0
  %4887 = vmatmul.mubr.f32.gmra.mxu0 %v4773
  %v4888 = vpop.f32.mrf.mxu0
  %v4889 = vadd.f32 0.0, %v4888
  %v4890 = vpop.f32.mrf.mxu0
  %4891 = vmatprep.mubr.f32.mxu0 0.0
  %4892 = vmatmul.mubr.f32.gmra.mxu0 %v4776
  %v4893 = vpop.f32.mrf.mxu0
  %v4894 = vadd.f32 0.0, %v4893
  %v4895 = vpop.f32.mrf.mxu0
  %4896 = vmatprep.mubr.f32.mxu0 0.0
  %4897 = vmatmul.mubr.f32.gmra.mxu0 %v4779
  %v4898 = vpop.f32.mrf.mxu0
  %v4899 = vadd.f32 0.0, %v4898
  %v4900 = vpop.f32.mrf.mxu0
  %4901 = vmatprep.mubr.f32.mxu0 0.0
  %4902 = vmatmul.mubr.f32.gmra.mxu0 %v4782
  %v4903 = vpop.f32.mrf.mxu0
  %v4904 = vadd.f32 0.0, %v4903
  %v4905 = vpop.f32.mrf.mxu0
  %4906 = vmatprep.mubr.f32.mxu0 0.0
  %4907 = vmatmul.mubr.f32.gmra.mxu0 %v4785
  %v4908 = vpop.f32.mrf.mxu0
  %v4909 = vadd.f32 0.0, %v4908
  %v4910 = vpop.f32.mrf.mxu0
  %4911 = vmatprep.mubr.f32.mxu0 0.0
  %4912 = vmatmul.mubr.f32.gmra.mxu0 %v4788
  %v4913 = vpop.f32.mrf.mxu0
  %v4914 = vadd.f32 0.0, %v4913
  %v4915 = vpop.f32.mrf.mxu0
  %4916 = vmatprep.mubr.f32.mxu0 0.0
  %4917 = vmatmul.mubr.f32.gmra.mxu0 %v4791
  %v4918 = vpop.f32.mrf.mxu0
  %v4919 = vadd.f32 0.0, %v4918
  %v4920 = vpop.f32.mrf.mxu0
  %4921 = vmatprep.mubr.f32.mxu0 0.0
  %4922 = vmatmul.mubr.f32.gmra.mxu0 %v4794
  %v4923 = vpop.f32.mrf.mxu0
  %v4924 = vadd.f32 0.0, %v4923
  %v4925 = vpop.f32.mrf.mxu0
  %4926 = vmatprep.mubr.f32.mxu0 0.0
  %4927 = vmatmul.mubr.f32.gmra.mxu0 %v4797
  %v4928 = vpop.f32.mrf.mxu0
  %v4929 = vadd.f32 0.0, %v4928
  %v4930 = vpop.f32.mrf.mxu0
  %4931 = vmatprep.mubr.f32.mxu0 0.0
  %4932 = vmatmul.mubr.f32.gmra.mxu0 %v4800
  %v4933 = vpop.f32.mrf.mxu0
  %v4934 = vadd.f32 0.0, %v4933
  %v4935 = vpop.f32.mrf.mxu0
  %4936 = vmatprep.mubr.f32.mxu0 0.0
  %4937 = vmatmul.mubr.f32.gmra.mxu0 %v4803
  %v4938 = vpop.f32.mrf.mxu0
  %v4939 = vadd.f32 0.0, %v4938
  %v4940 = vpop.f32.mrf.mxu0
  %4941 = vmatprep.mubr.f32.mxu0 0.0
  %4942 = vmatmul.mubr.f32.gmra.mxu0 %v4806
  %v4943 = vpop.f32.mrf.mxu0
  %v4944 = vadd.f32 0.0, %v4943
  %v4945 = vpop.f32.mrf.mxu0
  %4946 = vmatprep.mubr.f32.mxu0 0.0
  %4947 = vmatmul.mubr.f32.gmra.mxu0 %v4809
  %v4948 = vpop.f32.mrf.mxu0
  %v4949 = vadd.f32 0.0, %v4948
  %v4950 = vpop.f32.mrf.mxu0
  %4951 = vmatprep.mubr.f32.mxu0 0.0
  %4952 = vmatmul.mubr.f32.gmra.mxu0 %v4812
  %v4953 = vpop.f32.mrf.mxu0
  %v4954 = vadd.f32 0.0, %v4953
  %v4955 = vpop.f32.mrf.mxu0
  %4956 = vmatprep.mubr.f32.mxu0 0.0
  %4957 = vmatmul.mubr.f32.gmra.mxu0 %v4815
  %v4958 = vpop.f32.mrf.mxu0
  %v4959 = vadd.f32 0.0, %v4958
  %v4960 = vpop.f32.mrf.mxu0
  %4961 = vdwg.mxu0
  %v4962 = vadd.f32 %v4603, %v4884
  %v4963 = vadd.f32 %v4604, %v4889
  %v4964 = vadd.f32 %v4605, %v4894
  %v4965 = vadd.f32 %v4606, %v4899
  %v4966 = vadd.f32 %v4607, %v4904
  %v4967 = vadd.f32 %v4608, %v4909
  %v4968 = vadd.f32 %v4609, %v4914
  %v4969 = vadd.f32 %v4610, %v4919
  %v4970 = vadd.f32 %v4611, %v4924
  %v4971 = vadd.f32 %v4612, %v4929
  %v4972 = vadd.f32 %v4613, %v4934
  %v4973 = vadd.f32 %v4614, %v4939
  %v4974 = vadd.f32 %v4615, %v4944
  %v4975 = vadd.f32 %v4616, %v4949
  %v4976 = vadd.f32 %v4617, %v4954
  %v4977 = vadd.f32 %v4618, %v4959
  %s4978 = scalar_lea.vmem %s6, 128
  %v4979 = vld [vmem:[%s4978] sm:$0xff]
  %v4980 = vld [vmem:[%s4978 + $0x8] sm:$0xff]
  %v4981 = vld [vmem:[%s4978 + $0x10] sm:$0xff]
  %v4982 = vld [vmem:[%s4978 + $0x18] sm:$0xff]
  %v4984 = vsel %vm458, %v3520, 0
  %v4987 = vsel %vm458, %v3521, 0
  %v4990 = vsel %vm458, %v3522, 0
  %v4993 = vsel %vm458, %v3523, 0
  %v4996 = vsel %vm458, %v3524, 0
  %v4999 = vsel %vm458, %v3525, 0
  %v5002 = vsel %vm458, %v3526, 0
  %v5005 = vsel %vm458, %v3527, 0
  %v5008 = vsel %vm458, %v3528, 0
  %v5011 = vsel %vm458, %v3529, 0
  %v5014 = vsel %vm458, %v3530, 0
  %v5017 = vsel %vm458, %v3531, 0
  %v5020 = vsel %vm458, %v3532, 0
  %v5023 = vsel %vm458, %v3533, 0
  %v5026 = vsel %vm458, %v3534, 0
  %v5029 = vsel %vm458, %v3535, 0
  %5031 = vmatprep.subr.mxu0 0.0
  %5032 = vmatpush1.msra.mxu0 0.0
  %5033 = vmatprep.subr.mxu0 0.0
  %5034 = vmatpush1.msra.mxu0 0.0
  %5035 = vmatprep.subr.mxu0 0.0
  %5036 = vmatpush1.msra.mxu0 0.0
  %5037 = vmatprep.subr.mxu0 0.0
  %5038 = vmatpush1.msra.mxu0 0.0
  %5039 = vmatprep.subr.mxu0 0.0
  %5040 = vmatpush1.msra.mxu0 0.0
  %5041 = vmatprep.subr.mxu0 0.0
  %5042 = vmatpush1.msra.mxu0 0.0
  %5043 = vmatprep.subr.mxu0 0.0
  %5044 = vmatpush1.msra.mxu0 0.0
  %5045 = vmatprep.subr.mxu0 0.0
  %5046 = vmatpush1.msra.mxu0 0.0
  %5047 = vmatprep.subr.mxu0 0.0
  %5048 = vmatpush1.msra.mxu0 0.0
  %5049 = vmatprep.subr.mxu0 0.0
  %5050 = vmatpush1.msra.mxu0 0.0
  %5051 = vmatprep.subr.mxu0 0.0
  %5052 = vmatpush1.msra.mxu0 0.0
  %5053 = vmatprep.subr.mxu0 0.0
  %5054 = vmatpush1.msra.mxu0 0.0
  %5055 = vmatprep.subr.mxu0 0.0
  %5056 = vmatpush1.msra.mxu0 %v4982
  %5057 = vmatprep.subr.mxu0 0.0
  %5058 = vmatpush1.msra.mxu0 %v4981
  %5059 = vmatprep.subr.mxu0 0.0
  %5060 = vmatpush1.msra.mxu0 %v4980
  %5061 = vmatprep.subr.mxu0 0.0
  %5062 = vmatpush1.msra.mxu0 %v4979
  %5063 = vmatprep.subr.mxu0 0.0
  %5064 = vmatpush2.msra.mxu0 0.0
  %5065 = vmatprep.subr.mxu0 0.0
  %5066 = vmatpush2.msra.mxu0 0.0
  %5067 = vmatprep.subr.mxu0 0.0
  %5068 = vmatpush2.msra.mxu0 0.0
  %5069 = vmatprep.subr.mxu0 0.0
  %5070 = vmatpush2.msra.mxu0 0.0
  %5071 = vmatprep.subr.mxu0 0.0
  %5072 = vmatpush2.msra.mxu0 0.0
  %5073 = vmatprep.subr.mxu0 0.0
  %5074 = vmatpush2.msra.mxu0 0.0
  %5075 = vmatprep.subr.mxu0 0.0
  %5076 = vmatpush2.msra.mxu0 0.0
  %5077 = vmatprep.subr.mxu0 0.0
  %5078 = vmatpush2.msra.mxu0 0.0
  %5079 = vmatprep.subr.mxu0 0.0
  %5080 = vmatpush2.msra.mxu0 0.0
  %5081 = vmatprep.subr.mxu0 0.0
  %5082 = vmatpush2.msra.mxu0 0.0
  %5083 = vmatprep.subr.mxu0 0.0
  %5084 = vmatpush2.msra.mxu0 0.0
  %5085 = vmatprep.subr.mxu0 0.0
  %5086 = vmatpush2.msra.mxu0 0.0
  %5087 = vmatprep.subr.mxu0 0.0
  %5088 = vmatpush2.msra.mxu0 0.0
  %5089 = vmatprep.subr.mxu0 0.0
  %5090 = vmatpush2.msra.mxu0 0.0
  %5091 = vmatprep.subr.mxu0 0.0
  %5092 = vmatpush2.msra.mxu0 0.0
  %5093 = vmatprep.subr.mxu0 0.0
  %5094 = vmatpush2.msra.mxu0 0.0
  %5095 = vmatprep.mubr.f32.mxu0 0.0
  %5096 = vmatmul.mubr.f32.gmra.mxu0 %v4984
  %v5097 = vpop.f32.mrf.mxu0
  %v5098 = vadd.f32 0.0, %v5097
  %v5099 = vpop.f32.mrf.mxu0
  %5100 = vmatprep.mubr.f32.mxu0 0.0
  %5101 = vmatmul.mubr.f32.gmra.mxu0 %v4987
  %v5102 = vpop.f32.mrf.mxu0
  %v5103 = vadd.f32 0.0, %v5102
  %v5104 = vpop.f32.mrf.mxu0
  %5105 = vmatprep.mubr.f32.mxu0 0.0
  %5106 = vmatmul.mubr.f32.gmra.mxu0 %v4990
  %v5107 = vpop.f32.mrf.mxu0
  %v5108 = vadd.f32 0.0, %v5107
  %v5109 = vpop.f32.mrf.mxu0
  %5110 = vmatprep.mubr.f32.mxu0 0.0
  %5111 = vmatmul.mubr.f32.gmra.mxu0 %v4993
  %v5112 = vpop.f32.mrf.mxu0
  %v5113 = vadd.f32 0.0, %v5112
  %v5114 = vpop.f32.mrf.mxu0
  %5115 = vmatprep.mubr.f32.mxu0 0.0
  %5116 = vmatmul.mubr.f32.gmra.mxu0 %v4996
  %v5117 = vpop.f32.mrf.mxu0
  %v5118 = vadd.f32 0.0, %v5117
  %v5119 = vpop.f32.mrf.mxu0
  %5120 = vmatprep.mubr.f32.mxu0 0.0
  %5121 = vmatmul.mubr.f32.gmra.mxu0 %v4999
  %v5122 = vpop.f32.mrf.mxu0
  %v5123 = vadd.f32 0.0, %v5122
  %v5124 = vpop.f32.mrf.mxu0
  %5125 = vmatprep.mubr.f32.mxu0 0.0
  %5126 = vmatmul.mubr.f32.gmra.mxu0 %v5002
  %v5127 = vpop.f32.mrf.mxu0
  %v5128 = vadd.f32 0.0, %v5127
  %v5129 = vpop.f32.mrf.mxu0
  %5130 = vmatprep.mubr.f32.mxu0 0.0
  %5131 = vmatmul.mubr.f32.gmra.mxu0 %v5005
  %v5132 = vpop.f32.mrf.mxu0
  %v5133 = vadd.f32 0.0, %v5132
  %v5134 = vpop.f32.mrf.mxu0
  %5135 = vmatprep.mubr.f32.mxu0 0.0
  %5136 = vmatmul.mubr.f32.gmra.mxu0 %v5008
  %v5137 = vpop.f32.mrf.mxu0
  %v5138 = vadd.f32 0.0, %v5137
  %v5139 = vpop.f32.mrf.mxu0
  %5140 = vmatprep.mubr.f32.mxu0 0.0
  %5141 = vmatmul.mubr.f32.gmra.mxu0 %v5011
  %v5142 = vpop.f32.mrf.mxu0
  %v5143 = vadd.f32 0.0, %v5142
  %v5144 = vpop.f32.mrf.mxu0
  %5145 = vmatprep.mubr.f32.mxu0 0.0
  %5146 = vmatmul.mubr.f32.gmra.mxu0 %v5014
  %v5147 = vpop.f32.mrf.mxu0
  %v5148 = vadd.f32 0.0, %v5147
  %v5149 = vpop.f32.mrf.mxu0
  %5150 = vmatprep.mubr.f32.mxu0 0.0
  %5151 = vmatmul.mubr.f32.gmra.mxu0 %v5017
  %v5152 = vpop.f32.mrf.mxu0
  %v5153 = vadd.f32 0.0, %v5152
  %v5154 = vpop.f32.mrf.mxu0
  %5155 = vmatprep.mubr.f32.mxu0 0.0
  %5156 = vmatmul.mubr.f32.gmra.mxu0 %v5020
  %v5157 = vpop.f32.mrf.mxu0
  %v5158 = vadd.f32 0.0, %v5157
  %v5159 = vpop.f32.mrf.mxu0
  %5160 = vmatprep.mubr.f32.mxu0 0.0
  %5161 = vmatmul.mubr.f32.gmra.mxu0 %v5023
  %v5162 = vpop.f32.mrf.mxu0
  %v5163 = vadd.f32 0.0, %v5162
  %v5164 = vpop.f32.mrf.mxu0
  %5165 = vmatprep.mubr.f32.mxu0 0.0
  %5166 = vmatmul.mubr.f32.gmra.mxu0 %v5026
  %v5167 = vpop.f32.mrf.mxu0
  %v5168 = vadd.f32 0.0, %v5167
  %v5169 = vpop.f32.mrf.mxu0
  %5170 = vmatprep.mubr.f32.mxu0 0.0
  %5171 = vmatmul.mubr.f32.gmra.mxu0 %v5029
  %v5172 = vpop.f32.mrf.mxu0
  %v5173 = vadd.f32 0.0, %v5172
  %v5174 = vpop.f32.mrf.mxu0
  %5175 = vdwg.mxu0
  %v5176 = vadd.f32 %v4962, %v5098
  %v5177 = vadd.f32 %v4963, %v5103
  %v5178 = vadd.f32 %v4964, %v5108
  %v5179 = vadd.f32 %v4965, %v5113
  %v5180 = vadd.f32 %v4966, %v5118
  %v5181 = vadd.f32 %v4967, %v5123
  %v5182 = vadd.f32 %v4968, %v5128
  %v5183 = vadd.f32 %v4969, %v5133
  %v5184 = vadd.f32 %v4970, %v5138
  %v5185 = vadd.f32 %v4971, %v5143
  %v5186 = vadd.f32 %v4972, %v5148
  %v5187 = vadd.f32 %v4973, %v5153
  %v5188 = vadd.f32 %v4974, %v5158
  %v5189 = vadd.f32 %v4975, %v5163
  %v5190 = vadd.f32 %v4976, %v5168
  %v5191 = vadd.f32 %v4977, %v5173
  %5192 = vmatprep.subr.mxu0 0.0
  %5193 = vmatpush1.msra.mxu0 %v3535
  %5194 = vmatprep.subr.mxu0 0.0
  %5195 = vmatpush1.msra.mxu0 %v3534
  %5196 = vmatprep.subr.mxu0 0.0
  %5197 = vmatpush1.msra.mxu0 %v3533
  %5198 = vmatprep.subr.mxu0 0.0
  %5199 = vmatpush1.msra.mxu0 %v3532
  %5200 = vmatprep.subr.mxu0 0.0
  %5201 = vmatpush1.msra.mxu0 %v3531
  %5202 = vmatprep.subr.mxu0 0.0
  %5203 = vmatpush1.msra.mxu0 %v3530
  %5204 = vmatprep.subr.mxu0 0.0
  %5205 = vmatpush1.msra.mxu0 %v3529
  %5206 = vmatprep.subr.mxu0 0.0
  %5207 = vmatpush1.msra.mxu0 %v3528
  %5208 = vmatprep.subr.mxu0 0.0
  %5209 = vmatpush1.msra.mxu0 %v3527
  %5210 = vmatprep.subr.mxu0 0.0
  %5211 = vmatpush1.msra.mxu0 %v3526
  %5212 = vmatprep.subr.mxu0 0.0
  %5213 = vmatpush1.msra.mxu0 %v3525
  %5214 = vmatprep.subr.mxu0 0.0
  %5215 = vmatpush1.msra.mxu0 %v3524
  %5216 = vmatprep.subr.mxu0 0.0
  %5217 = vmatpush1.msra.mxu0 %v3523
  %5218 = vmatprep.subr.mxu0 0.0
  %5219 = vmatpush1.msra.mxu0 %v3522
  %5220 = vmatprep.subr.mxu0 0.0
  %5221 = vmatpush1.msra.mxu0 %v3521
  %5222 = vmatprep.subr.mxu0 0.0
  %5223 = vmatpush1.msra.mxu0 %v3520
  %5224 = vmatprep.subr.mxu0 0.0
  %5225 = vmatpush2.msra.mxu0 0.0
  %5226 = vmatprep.subr.mxu0 0.0
  %5227 = vmatpush2.msra.mxu0 0.0
  %5228 = vmatprep.subr.mxu0 0.0
  %5229 = vmatpush2.msra.mxu0 0.0
  %5230 = vmatprep.subr.mxu0 0.0
  %5231 = vmatpush2.msra.mxu0 0.0
  %5232 = vmatprep.subr.mxu0 0.0
  %5233 = vmatpush2.msra.mxu0 0.0
  %5234 = vmatprep.subr.mxu0 0.0
  %5235 = vmatpush2.msra.mxu0 0.0
  %5236 = vmatprep.subr.mxu0 0.0
  %5237 = vmatpush2.msra.mxu0 0.0
  %5238 = vmatprep.subr.mxu0 0.0
  %5239 = vmatpush2.msra.mxu0 0.0
  %5240 = vmatprep.subr.mxu0 0.0
  %5241 = vmatpush2.msra.mxu0 0.0
  %5242 = vmatprep.subr.mxu0 0.0
  %5243 = vmatpush2.msra.mxu0 0.0
  %5244 = vmatprep.subr.mxu0 0.0
  %5245 = vmatpush2.msra.mxu0 0.0
  %5246 = vmatprep.subr.mxu0 0.0
  %5247 = vmatpush2.msra.mxu0 0.0
  %5248 = vmatprep.subr.mxu0 0.0
  %5249 = vmatpush2.msra.mxu0 0.0
  %5250 = vmatprep.subr.mxu0 0.0
  %5251 = vmatpush2.msra.mxu0 0.0
  %5252 = vmatprep.subr.mxu0 0.0
  %5253 = vmatpush2.msra.mxu0 0.0
  %5254 = vmatprep.subr.mxu0 0.0
  %5255 = vmatpush2.msra.mxu0 0.0
  %5256 = vmatprep.mubr.f32.mxu0 0.0
  %5257 = vmatmul.mubr.f32.gmra.mxu0 %v2017
  %v5258 = vpop.f32.mrf.mxu0
  %v5259 = vadd.f32 0.0, %v5258
  %v5260 = vpop.f32.mrf.mxu0
  %5261 = vmatprep.mubr.f32.mxu0 0.0
  %5262 = vmatmul.mubr.f32.gmra.mxu0 %v2018
  %v5263 = vpop.f32.mrf.mxu0
  %v5264 = vadd.f32 0.0, %v5263
  %v5265 = vpop.f32.mrf.mxu0
  %5266 = vmatprep.mubr.f32.mxu0 0.0
  %5267 = vmatmul.mubr.f32.gmra.mxu0 %v2019
  %v5268 = vpop.f32.mrf.mxu0
  %v5269 = vadd.f32 0.0, %v5268
  %v5270 = vpop.f32.mrf.mxu0
  %5271 = vmatprep.mubr.f32.mxu0 0.0
  %5272 = vmatmul.mubr.f32.gmra.mxu0 %v2020
  %v5273 = vpop.f32.mrf.mxu0
  %v5274 = vadd.f32 0.0, %v5273
  %v5275 = vpop.f32.mrf.mxu0
  %5276 = vmatprep.mubr.f32.mxu0 0.0
  %5277 = vmatmul.mubr.f32.gmra.mxu0 %v2021
  %v5278 = vpop.f32.mrf.mxu0
  %v5279 = vadd.f32 0.0, %v5278
  %v5280 = vpop.f32.mrf.mxu0
  %5281 = vmatprep.mubr.f32.mxu0 0.0
  %5282 = vmatmul.mubr.f32.gmra.mxu0 %v2022
  %v5283 = vpop.f32.mrf.mxu0
  %v5284 = vadd.f32 0.0, %v5283
  %v5285 = vpop.f32.mrf.mxu0
  %5286 = vmatprep.mubr.f32.mxu0 0.0
  %5287 = vmatmul.mubr.f32.gmra.mxu0 %v2023
  %v5288 = vpop.f32.mrf.mxu0
  %v5289 = vadd.f32 0.0, %v5288
  %v5290 = vpop.f32.mrf.mxu0
  %5291 = vmatprep.mubr.f32.mxu0 0.0
  %5292 = vmatmul.mubr.f32.gmra.mxu0 %v2024
  %v5293 = vpop.f32.mrf.mxu0
  %v5294 = vadd.f32 0.0, %v5293
  %v5295 = vpop.f32.mrf.mxu0
  %5296 = vmatprep.mubr.f32.mxu0 0.0
  %5297 = vmatmul.mubr.f32.gmra.mxu0 %v2025
  %v5298 = vpop.f32.mrf.mxu0
  %v5299 = vadd.f32 0.0, %v5298
  %v5300 = vpop.f32.mrf.mxu0
  %5301 = vmatprep.mubr.f32.mxu0 0.0
  %5302 = vmatmul.mubr.f32.gmra.mxu0 %v2026
  %v5303 = vpop.f32.mrf.mxu0
  %v5304 = vadd.f32 0.0, %v5303
  %v5305 = vpop.f32.mrf.mxu0
  %5306 = vmatprep.mubr.f32.mxu0 0.0
  %5307 = vmatmul.mubr.f32.gmra.mxu0 %v2027
  %v5308 = vpop.f32.mrf.mxu0
  %v5309 = vadd.f32 0.0, %v5308
  %v5310 = vpop.f32.mrf.mxu0
  %5311 = vmatprep.mubr.f32.mxu0 0.0
  %5312 = vmatmul.mubr.f32.gmra.mxu0 %v2028
  %v5313 = vpop.f32.mrf.mxu0
  %v5314 = vadd.f32 0.0, %v5313
  %v5315 = vpop.f32.mrf.mxu0
  %5316 = vmatprep.mubr.f32.mxu0 0.0
  %5317 = vmatmul.mubr.f32.gmra.mxu0 %v2029
  %v5318 = vpop.f32.mrf.mxu0
  %v5319 = vadd.f32 0.0, %v5318
  %v5320 = vpop.f32.mrf.mxu0
  %5321 = vmatprep.mubr.f32.mxu0 0.0
  %5322 = vmatmul.mubr.f32.gmra.mxu0 %v2030
  %v5323 = vpop.f32.mrf.mxu0
  %v5324 = vadd.f32 0.0, %v5323
  %v5325 = vpop.f32.mrf.mxu0
  %5326 = vmatprep.mubr.f32.mxu0 0.0
  %5327 = vmatmul.mubr.f32.gmra.mxu0 %v2031
  %v5328 = vpop.f32.mrf.mxu0
  %v5329 = vadd.f32 0.0, %v5328
  %v5330 = vpop.f32.mrf.mxu0
  %5331 = vmatprep.mubr.f32.mxu0 0.0
  %5332 = vmatmul.mubr.f32.gmra.mxu0 %v2032
  %v5333 = vpop.f32.mrf.mxu0
  %v5334 = vadd.f32 0.0, %v5333
  %v5335 = vpop.f32.mrf.mxu0
  %5336 = vdwg.mxu0
  %s5337 = scalar_lea.vmem %s6, 160
  %v5338 = vld [vmem:[%s5337] sm:$0xff]
  %v5339 = vld [vmem:[%s5337 + $0x8] sm:$0xff]
  %v5340 = vld [vmem:[%s5337 + $0x10] sm:$0xff]
  %v5341 = vld [vmem:[%s5337 + $0x18] sm:$0xff]
  %v5343 = vsel %vm458, %v5259, 0
  %v5346 = vsel %vm458, %v5264, 0
  %v5349 = vsel %vm458, %v5269, 0
  %v5352 = vsel %vm458, %v5274, 0
  %v5355 = vsel %vm458, %v5279, 0
  %v5358 = vsel %vm458, %v5284, 0
  %v5361 = vsel %vm458, %v5289, 0
  %v5364 = vsel %vm458, %v5294, 0
  %v5367 = vsel %vm458, %v5299, 0
  %v5370 = vsel %vm458, %v5304, 0
  %v5373 = vsel %vm458, %v5309, 0
  %v5376 = vsel %vm458, %v5314, 0
  %v5379 = vsel %vm458, %v5319, 0
  %v5382 = vsel %vm458, %v5324, 0
  %v5385 = vsel %vm458, %v5329, 0
  %v5388 = vsel %vm458, %v5334, 0
  %5390 = vmatprep.subr.mxu0 0.0
  %5391 = vmatpush1.msra.mxu0 0.0
  %5392 = vmatprep.subr.mxu0 0.0
  %5393 = vmatpush1.msra.mxu0 0.0
  %5394 = vmatprep.subr.mxu0 0.0
  %5395 = vmatpush1.msra.mxu0 0.0
  %5396 = vmatprep.subr.mxu0 0.0
  %5397 = vmatpush1.msra.mxu0 0.0
  %5398 = vmatprep.subr.mxu0 0.0
  %5399 = vmatpush1.msra.mxu0 0.0
  %5400 = vmatprep.subr.mxu0 0.0
  %5401 = vmatpush1.msra.mxu0 0.0
  %5402 = vmatprep.subr.mxu0 0.0
  %5403 = vmatpush1.msra.mxu0 0.0
  %5404 = vmatprep.subr.mxu0 0.0
  %5405 = vmatpush1.msra.mxu0 0.0
  %5406 = vmatprep.subr.mxu0 0.0
  %5407 = vmatpush1.msra.mxu0 0.0
  %5408 = vmatprep.subr.mxu0 0.0
  %5409 = vmatpush1.msra.mxu0 0.0
  %5410 = vmatprep.subr.mxu0 0.0
  %5411 = vmatpush1.msra.mxu0 0.0
  %5412 = vmatprep.subr.mxu0 0.0
  %5413 = vmatpush1.msra.mxu0 0.0
  %5414 = vmatprep.subr.mxu0 0.0
  %5415 = vmatpush1.msra.mxu0 %v5341
  %5416 = vmatprep.subr.mxu0 0.0
  %5417 = vmatpush1.msra.mxu0 %v5340
  %5418 = vmatprep.subr.mxu0 0.0
  %5419 = vmatpush1.msra.mxu0 %v5339
  %5420 = vmatprep.subr.mxu0 0.0
  %5421 = vmatpush1.msra.mxu0 %v5338
  %5422 = vmatprep.subr.mxu0 0.0
  %5423 = vmatpush2.msra.mxu0 0.0
  %5424 = vmatprep.subr.mxu0 0.0
  %5425 = vmatpush2.msra.mxu0 0.0
  %5426 = vmatprep.subr.mxu0 0.0
  %5427 = vmatpush2.msra.mxu0 0.0
  %5428 = vmatprep.subr.mxu0 0.0
  %5429 = vmatpush2.msra.mxu0 0.0
  %5430 = vmatprep.subr.mxu0 0.0
  %5431 = vmatpush2.msra.mxu0 0.0
  %5432 = vmatprep.subr.mxu0 0.0
  %5433 = vmatpush2.msra.mxu0 0.0
  %5434 = vmatprep.subr.mxu0 0.0
  %5435 = vmatpush2.msra.mxu0 0.0
  %5436 = vmatprep.subr.mxu0 0.0
  %5437 = vmatpush2.msra.mxu0 0.0
  %5438 = vmatprep.subr.mxu0 0.0
  %5439 = vmatpush2.msra.mxu0 0.0
  %5440 = vmatprep.subr.mxu0 0.0
  %5441 = vmatpush2.msra.mxu0 0.0
  %5442 = vmatprep.subr.mxu0 0.0
  %5443 = vmatpush2.msra.mxu0 0.0
  %5444 = vmatprep.subr.mxu0 0.0
  %5445 = vmatpush2.msra.mxu0 0.0
  %5446 = vmatprep.subr.mxu0 0.0
  %5447 = vmatpush2.msra.mxu0 0.0
  %5448 = vmatprep.subr.mxu0 0.0
  %5449 = vmatpush2.msra.mxu0 0.0
  %5450 = vmatprep.subr.mxu0 0.0
  %5451 = vmatpush2.msra.mxu0 0.0
  %5452 = vmatprep.subr.mxu0 0.0
  %5453 = vmatpush2.msra.mxu0 0.0
  %5454 = vmatprep.mubr.f32.mxu0 0.0
  %5455 = vmatmul.mubr.f32.gmra.mxu0 %v5343
  %v5456 = vpop.f32.mrf.mxu0
  %v5457 = vadd.f32 0.0, %v5456
  %v5458 = vpop.f32.mrf.mxu0
  %5459 = vmatprep.mubr.f32.mxu0 0.0
  %5460 = vmatmul.mubr.f32.gmra.mxu0 %v5346
  %v5461 = vpop.f32.mrf.mxu0
  %v5462 = vadd.f32 0.0, %v5461
  %v5463 = vpop.f32.mrf.mxu0
  %5464 = vmatprep.mubr.f32.mxu0 0.0
  %5465 = vmatmul.mubr.f32.gmra.mxu0 %v5349
  %v5466 = vpop.f32.mrf.mxu0
  %v5467 = vadd.f32 0.0, %v5466
  %v5468 = vpop.f32.mrf.mxu0
  %5469 = vmatprep.mubr.f32.mxu0 0.0
  %5470 = vmatmul.mubr.f32.gmra.mxu0 %v5352
  %v5471 = vpop.f32.mrf.mxu0
  %v5472 = vadd.f32 0.0, %v5471
  %v5473 = vpop.f32.mrf.mxu0
  %5474 = vmatprep.mubr.f32.mxu0 0.0
  %5475 = vmatmul.mubr.f32.gmra.mxu0 %v5355
  %v5476 = vpop.f32.mrf.mxu0
  %v5477 = vadd.f32 0.0, %v5476
  %v5478 = vpop.f32.mrf.mxu0
  %5479 = vmatprep.mubr.f32.mxu0 0.0
  %5480 = vmatmul.mubr.f32.gmra.mxu0 %v5358
  %v5481 = vpop.f32.mrf.mxu0
  %v5482 = vadd.f32 0.0, %v5481
  %v5483 = vpop.f32.mrf.mxu0
  %5484 = vmatprep.mubr.f32.mxu0 0.0
  %5485 = vmatmul.mubr.f32.gmra.mxu0 %v5361
  %v5486 = vpop.f32.mrf.mxu0
  %v5487 = vadd.f32 0.0, %v5486
  %v5488 = vpop.f32.mrf.mxu0
  %5489 = vmatprep.mubr.f32.mxu0 0.0
  %5490 = vmatmul.mubr.f32.gmra.mxu0 %v5364
  %v5491 = vpop.f32.mrf.mxu0
  %v5492 = vadd.f32 0.0, %v5491
  %v5493 = vpop.f32.mrf.mxu0
  %5494 = vmatprep.mubr.f32.mxu0 0.0
  %5495 = vmatmul.mubr.f32.gmra.mxu0 %v5367
  %v5496 = vpop.f32.mrf.mxu0
  %v5497 = vadd.f32 0.0, %v5496
  %v5498 = vpop.f32.mrf.mxu0
  %5499 = vmatprep.mubr.f32.mxu0 0.0
  %5500 = vmatmul.mubr.f32.gmra.mxu0 %v5370
  %v5501 = vpop.f32.mrf.mxu0
  %v5502 = vadd.f32 0.0, %v5501
  %v5503 = vpop.f32.mrf.mxu0
  %5504 = vmatprep.mubr.f32.mxu0 0.0
  %5505 = vmatmul.mubr.f32.gmra.mxu0 %v5373
  %v5506 = vpop.f32.mrf.mxu0
  %v5507 = vadd.f32 0.0, %v5506
  %v5508 = vpop.f32.mrf.mxu0
  %5509 = vmatprep.mubr.f32.mxu0 0.0
  %5510 = vmatmul.mubr.f32.gmra.mxu0 %v5376
  %v5511 = vpop.f32.mrf.mxu0
  %v5512 = vadd.f32 0.0, %v5511
  %v5513 = vpop.f32.mrf.mxu0
  %5514 = vmatprep.mubr.f32.mxu0 0.0
  %5515 = vmatmul.mubr.f32.gmra.mxu0 %v5379
  %v5516 = vpop.f32.mrf.mxu0
  %v5517 = vadd.f32 0.0, %v5516
  %v5518 = vpop.f32.mrf.mxu0
  %5519 = vmatprep.mubr.f32.mxu0 0.0
  %5520 = vmatmul.mubr.f32.gmra.mxu0 %v5382
  %v5521 = vpop.f32.mrf.mxu0
  %v5522 = vadd.f32 0.0, %v5521
  %v5523 = vpop.f32.mrf.mxu0
  %5524 = vmatprep.mubr.f32.mxu0 0.0
  %5525 = vmatmul.mubr.f32.gmra.mxu0 %v5385
  %v5526 = vpop.f32.mrf.mxu0
  %v5527 = vadd.f32 0.0, %v5526
  %v5528 = vpop.f32.mrf.mxu0
  %5529 = vmatprep.mubr.f32.mxu0 0.0
  %5530 = vmatmul.mubr.f32.gmra.mxu0 %v5388
  %v5531 = vpop.f32.mrf.mxu0
  %v5532 = vadd.f32 0.0, %v5531
  %v5533 = vpop.f32.mrf.mxu0
  %5534 = vdwg.mxu0
  %v5535 = vadd.f32 %v5176, %v5457
  %v5536 = vadd.f32 %v5177, %v5462
  %v5537 = vadd.f32 %v5178, %v5467
  %v5538 = vadd.f32 %v5179, %v5472
  %v5539 = vadd.f32 %v5180, %v5477
  %v5540 = vadd.f32 %v5181, %v5482
  %v5541 = vadd.f32 %v5182, %v5487
  %v5542 = vadd.f32 %v5183, %v5492
  %v5543 = vadd.f32 %v5184, %v5497
  %v5544 = vadd.f32 %v5185, %v5502
  %v5545 = vadd.f32 %v5186, %v5507
  %v5546 = vadd.f32 %v5187, %v5512
  %v5547 = vadd.f32 %v5188, %v5517
  %v5548 = vadd.f32 %v5189, %v5522
  %v5549 = vadd.f32 %v5190, %v5527
  %v5550 = vadd.f32 %v5191, %v5532
  %5551 = vmatprep.subr.mxu0 0.0
  %5552 = vmatpush1.msra.mxu0 %v3535
  %5553 = vmatprep.subr.mxu0 0.0
  %5554 = vmatpush1.msra.mxu0 %v3534
  %5555 = vmatprep.subr.mxu0 0.0
  %5556 = vmatpush1.msra.mxu0 %v3533
  %5557 = vmatprep.subr.mxu0 0.0
  %5558 = vmatpush1.msra.mxu0 %v3532
  %5559 = vmatprep.subr.mxu0 0.0
  %5560 = vmatpush1.msra.mxu0 %v3531
  %5561 = vmatprep.subr.mxu0 0.0
  %5562 = vmatpush1.msra.mxu0 %v3530
  %5563 = vmatprep.subr.mxu0 0.0
  %5564 = vmatpush1.msra.mxu0 %v3529
  %5565 = vmatprep.subr.mxu0 0.0
  %5566 = vmatpush1.msra.mxu0 %v3528
  %5567 = vmatprep.subr.mxu0 0.0
  %5568 = vmatpush1.msra.mxu0 %v3527
  %5569 = vmatprep.subr.mxu0 0.0
  %5570 = vmatpush1.msra.mxu0 %v3526
  %5571 = vmatprep.subr.mxu0 0.0
  %5572 = vmatpush1.msra.mxu0 %v3525
  %5573 = vmatprep.subr.mxu0 0.0
  %5574 = vmatpush1.msra.mxu0 %v3524
  %5575 = vmatprep.subr.mxu0 0.0
  %5576 = vmatpush1.msra.mxu0 %v3523
  %5577 = vmatprep.subr.mxu0 0.0
  %5578 = vmatpush1.msra.mxu0 %v3522
  %5579 = vmatprep.subr.mxu0 0.0
  %5580 = vmatpush1.msra.mxu0 %v3521
  %5581 = vmatprep.subr.mxu0 0.0
  %5582 = vmatpush1.msra.mxu0 %v3520
  %5583 = vmatprep.subr.mxu0 0.0
  %5584 = vmatpush2.msra.mxu0 0.0
  %5585 = vmatprep.subr.mxu0 0.0
  %5586 = vmatpush2.msra.mxu0 0.0
  %5587 = vmatprep.subr.mxu0 0.0
  %5588 = vmatpush2.msra.mxu0 0.0
  %5589 = vmatprep.subr.mxu0 0.0
  %5590 = vmatpush2.msra.mxu0 0.0
  %5591 = vmatprep.subr.mxu0 0.0
  %5592 = vmatpush2.msra.mxu0 0.0
  %5593 = vmatprep.subr.mxu0 0.0
  %5594 = vmatpush2.msra.mxu0 0.0
  %5595 = vmatprep.subr.mxu0 0.0
  %5596 = vmatpush2.msra.mxu0 0.0
  %5597 = vmatprep.subr.mxu0 0.0
  %5598 = vmatpush2.msra.mxu0 0.0
  %5599 = vmatprep.subr.mxu0 0.0
  %5600 = vmatpush2.msra.mxu0 0.0
  %5601 = vmatprep.subr.mxu0 0.0
  %5602 = vmatpush2.msra.mxu0 0.0
  %5603 = vmatprep.subr.mxu0 0.0
  %5604 = vmatpush2.msra.mxu0 0.0
  %5605 = vmatprep.subr.mxu0 0.0
  %5606 = vmatpush2.msra.mxu0 0.0
  %5607 = vmatprep.subr.mxu0 0.0
  %5608 = vmatpush2.msra.mxu0 0.0
  %5609 = vmatprep.subr.mxu0 0.0
  %5610 = vmatpush2.msra.mxu0 0.0
  %5611 = vmatprep.subr.mxu0 0.0
  %5612 = vmatpush2.msra.mxu0 0.0
  %5613 = vmatprep.subr.mxu0 0.0
  %5614 = vmatpush2.msra.mxu0 0.0
  %5615 = vmatprep.mubr.f32.mxu0 0.0
  %5616 = vmatmul.mubr.f32.gmra.mxu0 %v2393
  %v5617 = vpop.f32.mrf.mxu0
  %v5618 = vadd.f32 0.0, %v5617
  %v5619 = vpop.f32.mrf.mxu0
  %5620 = vmatprep.mubr.f32.mxu0 0.0
  %5621 = vmatmul.mubr.f32.gmra.mxu0 %v2394
  %v5622 = vpop.f32.mrf.mxu0
  %v5623 = vadd.f32 0.0, %v5622
  %v5624 = vpop.f32.mrf.mxu0
  %5625 = vmatprep.mubr.f32.mxu0 0.0
  %5626 = vmatmul.mubr.f32.gmra.mxu0 %v2395
  %v5627 = vpop.f32.mrf.mxu0
  %v5628 = vadd.f32 0.0, %v5627
  %v5629 = vpop.f32.mrf.mxu0
  %5630 = vmatprep.mubr.f32.mxu0 0.0
  %5631 = vmatmul.mubr.f32.gmra.mxu0 %v2396
  %v5632 = vpop.f32.mrf.mxu0
  %v5633 = vadd.f32 0.0, %v5632
  %v5634 = vpop.f32.mrf.mxu0
  %5635 = vmatprep.mubr.f32.mxu0 0.0
  %5636 = vmatmul.mubr.f32.gmra.mxu0 %v2397
  %v5637 = vpop.f32.mrf.mxu0
  %v5638 = vadd.f32 0.0, %v5637
  %v5639 = vpop.f32.mrf.mxu0
  %5640 = vmatprep.mubr.f32.mxu0 0.0
  %5641 = vmatmul.mubr.f32.gmra.mxu0 %v2398
  %v5642 = vpop.f32.mrf.mxu0
  %v5643 = vadd.f32 0.0, %v5642
  %v5644 = vpop.f32.mrf.mxu0
  %5645 = vmatprep.mubr.f32.mxu0 0.0
  %5646 = vmatmul.mubr.f32.gmra.mxu0 %v2399
  %v5647 = vpop.f32.mrf.mxu0
  %v5648 = vadd.f32 0.0, %v5647
  %v5649 = vpop.f32.mrf.mxu0
  %5650 = vmatprep.mubr.f32.mxu0 0.0
  %5651 = vmatmul.mubr.f32.gmra.mxu0 %v2400
  %v5652 = vpop.f32.mrf.mxu0
  %v5653 = vadd.f32 0.0, %v5652
  %v5654 = vpop.f32.mrf.mxu0
  %5655 = vmatprep.mubr.f32.mxu0 0.0
  %5656 = vmatmul.mubr.f32.gmra.mxu0 %v2401
  %v5657 = vpop.f32.mrf.mxu0
  %v5658 = vadd.f32 0.0, %v5657
  %v5659 = vpop.f32.mrf.mxu0
  %5660 = vmatprep.mubr.f32.mxu0 0.0
  %5661 = vmatmul.mubr.f32.gmra.mxu0 %v2402
  %v5662 = vpop.f32.mrf.mxu0
  %v5663 = vadd.f32 0.0, %v5662
  %v5664 = vpop.f32.mrf.mxu0
  %5665 = vmatprep.mubr.f32.mxu0 0.0
  %5666 = vmatmul.mubr.f32.gmra.mxu0 %v2403
  %v5667 = vpop.f32.mrf.mxu0
  %v5668 = vadd.f32 0.0, %v5667
  %v5669 = vpop.f32.mrf.mxu0
  %5670 = vmatprep.mubr.f32.mxu0 0.0
  %5671 = vmatmul.mubr.f32.gmra.mxu0 %v2404
  %v5672 = vpop.f32.mrf.mxu0
  %v5673 = vadd.f32 0.0, %v5672
  %v5674 = vpop.f32.mrf.mxu0
  %5675 = vmatprep.mubr.f32.mxu0 0.0
  %5676 = vmatmul.mubr.f32.gmra.mxu0 %v2405
  %v5677 = vpop.f32.mrf.mxu0
  %v5678 = vadd.f32 0.0, %v5677
  %v5679 = vpop.f32.mrf.mxu0
  %5680 = vmatprep.mubr.f32.mxu0 0.0
  %5681 = vmatmul.mubr.f32.gmra.mxu0 %v2406
  %v5682 = vpop.f32.mrf.mxu0
  %v5683 = vadd.f32 0.0, %v5682
  %v5684 = vpop.f32.mrf.mxu0
  %5685 = vmatprep.mubr.f32.mxu0 0.0
  %5686 = vmatmul.mubr.f32.gmra.mxu0 %v2407
  %v5687 = vpop.f32.mrf.mxu0
  %v5688 = vadd.f32 0.0, %v5687
  %v5689 = vpop.f32.mrf.mxu0
  %5690 = vmatprep.mubr.f32.mxu0 0.0
  %5691 = vmatmul.mubr.f32.gmra.mxu0 %v2408
  %v5692 = vpop.f32.mrf.mxu0
  %v5693 = vadd.f32 0.0, %v5692
  %v5694 = vpop.f32.mrf.mxu0
  %5695 = vdwg.mxu0
  %s5696 = scalar_lea.vmem %s6, 192
  %v5697 = vld [vmem:[%s5696] sm:$0xff]
  %v5698 = vld [vmem:[%s5696 + $0x8] sm:$0xff]
  %v5699 = vld [vmem:[%s5696 + $0x10] sm:$0xff]
  %v5700 = vld [vmem:[%s5696 + $0x18] sm:$0xff]
  %v5702 = vsel %vm458, %v5618, 0
  %v5705 = vsel %vm458, %v5623, 0
  %v5708 = vsel %vm458, %v5628, 0
  %v5711 = vsel %vm458, %v5633, 0
  %v5714 = vsel %vm458, %v5638, 0
  %v5717 = vsel %vm458, %v5643, 0
  %v5720 = vsel %vm458, %v5648, 0
  %v5723 = vsel %vm458, %v5653, 0
  %v5726 = vsel %vm458, %v5658, 0
  %v5729 = vsel %vm458, %v5663, 0
  %v5732 = vsel %vm458, %v5668, 0
  %v5735 = vsel %vm458, %v5673, 0
  %v5738 = vsel %vm458, %v5678, 0
  %v5741 = vsel %vm458, %v5683, 0
  %v5744 = vsel %vm458, %v5688, 0
  %v5747 = vsel %vm458, %v5693, 0
  %5749 = vmatprep.subr.mxu0 0.0
  %5750 = vmatpush1.msra.mxu0 0.0
  %5751 = vmatprep.subr.mxu0 0.0
  %5752 = vmatpush1.msra.mxu0 0.0
  %5753 = vmatprep.subr.mxu0 0.0
  %5754 = vmatpush1.msra.mxu0 0.0
  %5755 = vmatprep.subr.mxu0 0.0
  %5756 = vmatpush1.msra.mxu0 0.0
  %5757 = vmatprep.subr.mxu0 0.0
  %5758 = vmatpush1.msra.mxu0 0.0
  %5759 = vmatprep.subr.mxu0 0.0
  %5760 = vmatpush1.msra.mxu0 0.0
  %5761 = vmatprep.subr.mxu0 0.0
  %5762 = vmatpush1.msra.mxu0 0.0
  %5763 = vmatprep.subr.mxu0 0.0
  %5764 = vmatpush1.msra.mxu0 0.0
  %5765 = vmatprep.subr.mxu0 0.0
  %5766 = vmatpush1.msra.mxu0 0.0
  %5767 = vmatprep.subr.mxu0 0.0
  %5768 = vmatpush1.msra.mxu0 0.0
  %5769 = vmatprep.subr.mxu0 0.0
  %5770 = vmatpush1.msra.mxu0 0.0
  %5771 = vmatprep.subr.mxu0 0.0
  %5772 = vmatpush1.msra.mxu0 0.0
  %5773 = vmatprep.subr.mxu0 0.0
  %5774 = vmatpush1.msra.mxu0 %v5700
  %5775 = vmatprep.subr.mxu0 0.0
  %5776 = vmatpush1.msra.mxu0 %v5699
  %5777 = vmatprep.subr.mxu0 0.0
  %5778 = vmatpush1.msra.mxu0 %v5698
  %5779 = vmatprep.subr.mxu0 0.0
  %5780 = vmatpush1.msra.mxu0 %v5697
  %5781 = vmatprep.subr.mxu0 0.0
  %5782 = vmatpush2.msra.mxu0 0.0
  %5783 = vmatprep.subr.mxu0 0.0
  %5784 = vmatpush2.msra.mxu0 0.0
  %5785 = vmatprep.subr.mxu0 0.0
  %5786 = vmatpush2.msra.mxu0 0.0
  %5787 = vmatprep.subr.mxu0 0.0
  %5788 = vmatpush2.msra.mxu0 0.0
  %5789 = vmatprep.subr.mxu0 0.0
  %5790 = vmatpush2.msra.mxu0 0.0
  %5791 = vmatprep.subr.mxu0 0.0
  %5792 = vmatpush2.msra.mxu0 0.0
  %5793 = vmatprep.subr.mxu0 0.0
  %5794 = vmatpush2.msra.mxu0 0.0
  %5795 = vmatprep.subr.mxu0 0.0
  %5796 = vmatpush2.msra.mxu0 0.0
  %5797 = vmatprep.subr.mxu0 0.0
  %5798 = vmatpush2.msra.mxu0 0.0
  %5799 = vmatprep.subr.mxu0 0.0
  %5800 = vmatpush2.msra.mxu0 0.0
  %5801 = vmatprep.subr.mxu0 0.0
  %5802 = vmatpush2.msra.mxu0 0.0
  %5803 = vmatprep.subr.mxu0 0.0
  %5804 = vmatpush2.msra.mxu0 0.0
  %5805 = vmatprep.subr.mxu0 0.0
  %5806 = vmatpush2.msra.mxu0 0.0
  %5807 = vmatprep.subr.mxu0 0.0
  %5808 = vmatpush2.msra.mxu0 0.0
  %5809 = vmatprep.subr.mxu0 0.0
  %5810 = vmatpush2.msra.mxu0 0.0
  %5811 = vmatprep.subr.mxu0 0.0
  %5812 = vmatpush2.msra.mxu0 0.0
  %5813 = vmatprep.mubr.f32.mxu0 0.0
  %5814 = vmatmul.mubr.f32.gmra.mxu0 %v5702
  %v5815 = vpop.f32.mrf.mxu0
  %v5816 = vadd.f32 0.0, %v5815
  %v5817 = vpop.f32.mrf.mxu0
  %5818 = vmatprep.mubr.f32.mxu0 0.0
  %5819 = vmatmul.mubr.f32.gmra.mxu0 %v5705
  %v5820 = vpop.f32.mrf.mxu0
  %v5821 = vadd.f32 0.0, %v5820
  %v5822 = vpop.f32.mrf.mxu0
  %5823 = vmatprep.mubr.f32.mxu0 0.0
  %5824 = vmatmul.mubr.f32.gmra.mxu0 %v5708
  %v5825 = vpop.f32.mrf.mxu0
  %v5826 = vadd.f32 0.0, %v5825
  %v5827 = vpop.f32.mrf.mxu0
  %5828 = vmatprep.mubr.f32.mxu0 0.0
  %5829 = vmatmul.mubr.f32.gmra.mxu0 %v5711
  %v5830 = vpop.f32.mrf.mxu0
  %v5831 = vadd.f32 0.0, %v5830
  %v5832 = vpop.f32.mrf.mxu0
  %5833 = vmatprep.mubr.f32.mxu0 0.0
  %5834 = vmatmul.mubr.f32.gmra.mxu0 %v5714
  %v5835 = vpop.f32.mrf.mxu0
  %v5836 = vadd.f32 0.0, %v5835
  %v5837 = vpop.f32.mrf.mxu0
  %5838 = vmatprep.mubr.f32.mxu0 0.0
  %5839 = vmatmul.mubr.f32.gmra.mxu0 %v5717
  %v5840 = vpop.f32.mrf.mxu0
  %v5841 = vadd.f32 0.0, %v5840
  %v5842 = vpop.f32.mrf.mxu0
  %5843 = vmatprep.mubr.f32.mxu0 0.0
  %5844 = vmatmul.mubr.f32.gmra.mxu0 %v5720
  %v5845 = vpop.f32.mrf.mxu0
  %v5846 = vadd.f32 0.0, %v5845
  %v5847 = vpop.f32.mrf.mxu0
  %5848 = vmatprep.mubr.f32.mxu0 0.0
  %5849 = vmatmul.mubr.f32.gmra.mxu0 %v5723
  %v5850 = vpop.f32.mrf.mxu0
  %v5851 = vadd.f32 0.0, %v5850
  %v5852 = vpop.f32.mrf.mxu0
  %5853 = vmatprep.mubr.f32.mxu0 0.0
  %5854 = vmatmul.mubr.f32.gmra.mxu0 %v5726
  %v5855 = vpop.f32.mrf.mxu0
  %v5856 = vadd.f32 0.0, %v5855
  %v5857 = vpop.f32.mrf.mxu0
  %5858 = vmatprep.mubr.f32.mxu0 0.0
  %5859 = vmatmul.mubr.f32.gmra.mxu0 %v5729
  %v5860 = vpop.f32.mrf.mxu0
  %v5861 = vadd.f32 0.0, %v5860
  %v5862 = vpop.f32.mrf.mxu0
  %5863 = vmatprep.mubr.f32.mxu0 0.0
  %5864 = vmatmul.mubr.f32.gmra.mxu0 %v5732
  %v5865 = vpop.f32.mrf.mxu0
  %v5866 = vadd.f32 0.0, %v5865
  %v5867 = vpop.f32.mrf.mxu0
  %5868 = vmatprep.mubr.f32.mxu0 0.0
  %5869 = vmatmul.mubr.f32.gmra.mxu0 %v5735
  %v5870 = vpop.f32.mrf.mxu0
  %v5871 = vadd.f32 0.0, %v5870
  %v5872 = vpop.f32.mrf.mxu0
  %5873 = vmatprep.mubr.f32.mxu0 0.0
  %5874 = vmatmul.mubr.f32.gmra.mxu0 %v5738
  %v5875 = vpop.f32.mrf.mxu0
  %v5876 = vadd.f32 0.0, %v5875
  %v5877 = vpop.f32.mrf.mxu0
  %5878 = vmatprep.mubr.f32.mxu0 0.0
  %5879 = vmatmul.mubr.f32.gmra.mxu0 %v5741
  %v5880 = vpop.f32.mrf.mxu0
  %v5881 = vadd.f32 0.0, %v5880
  %v5882 = vpop.f32.mrf.mxu0
  %5883 = vmatprep.mubr.f32.mxu0 0.0
  %5884 = vmatmul.mubr.f32.gmra.mxu0 %v5744
  %v5885 = vpop.f32.mrf.mxu0
  %v5886 = vadd.f32 0.0, %v5885
  %v5887 = vpop.f32.mrf.mxu0
  %5888 = vmatprep.mubr.f32.mxu0 0.0
  %5889 = vmatmul.mubr.f32.gmra.mxu0 %v5747
  %v5890 = vpop.f32.mrf.mxu0
  %v5891 = vadd.f32 0.0, %v5890
  %v5892 = vpop.f32.mrf.mxu0
  %5893 = vdwg.mxu0
  %v5894 = vadd.f32 %v5535, %v5816
  %v5895 = vadd.f32 %v5536, %v5821
  %v5896 = vadd.f32 %v5537, %v5826
  %v5897 = vadd.f32 %v5538, %v5831
  %v5898 = vadd.f32 %v5539, %v5836
  %v5899 = vadd.f32 %v5540, %v5841
  %v5900 = vadd.f32 %v5541, %v5846
  %v5901 = vadd.f32 %v5542, %v5851
  %v5902 = vadd.f32 %v5543, %v5856
  %v5903 = vadd.f32 %v5544, %v5861
  %v5904 = vadd.f32 %v5545, %v5866
  %v5905 = vadd.f32 %v5546, %v5871
  %v5906 = vadd.f32 %v5547, %v5876
  %v5907 = vadd.f32 %v5548, %v5881
  %v5908 = vadd.f32 %v5549, %v5886
  %v5909 = vadd.f32 %v5550, %v5891
  %5910 = vmatprep.subr.mxu0 0.0
  %5911 = vmatpush1.msra.mxu0 %v3535
  %5912 = vmatprep.subr.mxu0 0.0
  %5913 = vmatpush1.msra.mxu0 %v3534
  %5914 = vmatprep.subr.mxu0 0.0
  %5915 = vmatpush1.msra.mxu0 %v3533
  %5916 = vmatprep.subr.mxu0 0.0
  %5917 = vmatpush1.msra.mxu0 %v3532
  %5918 = vmatprep.subr.mxu0 0.0
  %5919 = vmatpush1.msra.mxu0 %v3531
  %5920 = vmatprep.subr.mxu0 0.0
  %5921 = vmatpush1.msra.mxu0 %v3530
  %5922 = vmatprep.subr.mxu0 0.0
  %5923 = vmatpush1.msra.mxu0 %v3529
  %5924 = vmatprep.subr.mxu0 0.0
  %5925 = vmatpush1.msra.mxu0 %v3528
  %5926 = vmatprep.subr.mxu0 0.0
  %5927 = vmatpush1.msra.mxu0 %v3527
  %5928 = vmatprep.subr.mxu0 0.0
  %5929 = vmatpush1.msra.mxu0 %v3526
  %5930 = vmatprep.subr.mxu0 0.0
  %5931 = vmatpush1.msra.mxu0 %v3525
  %5932 = vmatprep.subr.mxu0 0.0
  %5933 = vmatpush1.msra.mxu0 %v3524
  %5934 = vmatprep.subr.mxu0 0.0
  %5935 = vmatpush1.msra.mxu0 %v3523
  %5936 = vmatprep.subr.mxu0 0.0
  %5937 = vmatpush1.msra.mxu0 %v3522
  %5938 = vmatprep.subr.mxu0 0.0
  %5939 = vmatpush1.msra.mxu0 %v3521
  %5940 = vmatprep.subr.mxu0 0.0
  %5941 = vmatpush1.msra.mxu0 %v3520
  %5942 = vmatprep.subr.mxu0 0.0
  %5943 = vmatpush2.msra.mxu0 0.0
  %5944 = vmatprep.subr.mxu0 0.0
  %5945 = vmatpush2.msra.mxu0 0.0
  %5946 = vmatprep.subr.mxu0 0.0
  %5947 = vmatpush2.msra.mxu0 0.0
  %5948 = vmatprep.subr.mxu0 0.0
  %5949 = vmatpush2.msra.mxu0 0.0
  %5950 = vmatprep.subr.mxu0 0.0
  %5951 = vmatpush2.msra.mxu0 0.0
  %5952 = vmatprep.subr.mxu0 0.0
  %5953 = vmatpush2.msra.mxu0 0.0
  %5954 = vmatprep.subr.mxu0 0.0
  %5955 = vmatpush2.msra.mxu0 0.0
  %5956 = vmatprep.subr.mxu0 0.0
  %5957 = vmatpush2.msra.mxu0 0.0
  %5958 = vmatprep.subr.mxu0 0.0
  %5959 = vmatpush2.msra.mxu0 0.0
  %5960 = vmatprep.subr.mxu0 0.0
  %5961 = vmatpush2.msra.mxu0 0.0
  %5962 = vmatprep.subr.mxu0 0.0
  %5963 = vmatpush2.msra.mxu0 0.0
  %5964 = vmatprep.subr.mxu0 0.0
  %5965 = vmatpush2.msra.mxu0 0.0
  %5966 = vmatprep.subr.mxu0 0.0
  %5967 = vmatpush2.msra.mxu0 0.0
  %5968 = vmatprep.subr.mxu0 0.0
  %5969 = vmatpush2.msra.mxu0 0.0
  %5970 = vmatprep.subr.mxu0 0.0
  %5971 = vmatpush2.msra.mxu0 0.0
  %5972 = vmatprep.subr.mxu0 0.0
  %5973 = vmatpush2.msra.mxu0 0.0
  %5974 = vmatprep.mubr.f32.mxu0 0.0
  %5975 = vmatmul.mubr.f32.gmra.mxu0 %v2769
  %v5976 = vpop.f32.mrf.mxu0
  %v5977 = vadd.f32 0.0, %v5976
  %v5978 = vpop.f32.mrf.mxu0
  %5979 = vmatprep.mubr.f32.mxu0 0.0
  %5980 = vmatmul.mubr.f32.gmra.mxu0 %v2770
  %v5981 = vpop.f32.mrf.mxu0
  %v5982 = vadd.f32 0.0, %v5981
  %v5983 = vpop.f32.mrf.mxu0
  %5984 = vmatprep.mubr.f32.mxu0 0.0
  %5985 = vmatmul.mubr.f32.gmra.mxu0 %v2771
  %v5986 = vpop.f32.mrf.mxu0
  %v5987 = vadd.f32 0.0, %v5986
  %v5988 = vpop.f32.mrf.mxu0
  %5989 = vmatprep.mubr.f32.mxu0 0.0
  %5990 = vmatmul.mubr.f32.gmra.mxu0 %v2772
  %v5991 = vpop.f32.mrf.mxu0
  %v5992 = vadd.f32 0.0, %v5991
  %v5993 = vpop.f32.mrf.mxu0
  %5994 = vmatprep.mubr.f32.mxu0 0.0
  %5995 = vmatmul.mubr.f32.gmra.mxu0 %v2773
  %v5996 = vpop.f32.mrf.mxu0
  %v5997 = vadd.f32 0.0, %v5996
  %v5998 = vpop.f32.mrf.mxu0
  %5999 = vmatprep.mubr.f32.mxu0 0.0
  %6000 = vmatmul.mubr.f32.gmra.mxu0 %v2774
  %v6001 = vpop.f32.mrf.mxu0
  %v6002 = vadd.f32 0.0, %v6001
  %v6003 = vpop.f32.mrf.mxu0
  %6004 = vmatprep.mubr.f32.mxu0 0.0
  %6005 = vmatmul.mubr.f32.gmra.mxu0 %v2775
  %v6006 = vpop.f32.mrf.mxu0
  %v6007 = vadd.f32 0.0, %v6006
  %v6008 = vpop.f32.mrf.mxu0
  %6009 = vmatprep.mubr.f32.mxu0 0.0
  %6010 = vmatmul.mubr.f32.gmra.mxu0 %v2776
  %v6011 = vpop.f32.mrf.mxu0
  %v6012 = vadd.f32 0.0, %v6011
  %v6013 = vpop.f32.mrf.mxu0
  %6014 = vmatprep.mubr.f32.mxu0 0.0
  %6015 = vmatmul.mubr.f32.gmra.mxu0 %v2777
  %v6016 = vpop.f32.mrf.mxu0
  %v6017 = vadd.f32 0.0, %v6016
  %v6018 = vpop.f32.mrf.mxu0
  %6019 = vmatprep.mubr.f32.mxu0 0.0
  %6020 = vmatmul.mubr.f32.gmra.mxu0 %v2778
  %v6021 = vpop.f32.mrf.mxu0
  %v6022 = vadd.f32 0.0, %v6021
  %v6023 = vpop.f32.mrf.mxu0
  %6024 = vmatprep.mubr.f32.mxu0 0.0
  %6025 = vmatmul.mubr.f32.gmra.mxu0 %v2779
  %v6026 = vpop.f32.mrf.mxu0
  %v6027 = vadd.f32 0.0, %v6026
  %v6028 = vpop.f32.mrf.mxu0
  %6029 = vmatprep.mubr.f32.mxu0 0.0
  %6030 = vmatmul.mubr.f32.gmra.mxu0 %v2780
  %v6031 = vpop.f32.mrf.mxu0
  %v6032 = vadd.f32 0.0, %v6031
  %v6033 = vpop.f32.mrf.mxu0
  %6034 = vmatprep.mubr.f32.mxu0 0.0
  %6035 = vmatmul.mubr.f32.gmra.mxu0 %v2781
  %v6036 = vpop.f32.mrf.mxu0
  %v6037 = vadd.f32 0.0, %v6036
  %v6038 = vpop.f32.mrf.mxu0
  %6039 = vmatprep.mubr.f32.mxu0 0.0
  %6040 = vmatmul.mubr.f32.gmra.mxu0 %v2782
  %v6041 = vpop.f32.mrf.mxu0
  %v6042 = vadd.f32 0.0, %v6041
  %v6043 = vpop.f32.mrf.mxu0
  %6044 = vmatprep.mubr.f32.mxu0 0.0
  %6045 = vmatmul.mubr.f32.gmra.mxu0 %v2783
  %v6046 = vpop.f32.mrf.mxu0
  %v6047 = vadd.f32 0.0, %v6046
  %v6048 = vpop.f32.mrf.mxu0
  %6049 = vmatprep.mubr.f32.mxu0 0.0
  %6050 = vmatmul.mubr.f32.gmra.mxu0 %v2784
  %v6051 = vpop.f32.mrf.mxu0
  %v6052 = vadd.f32 0.0, %v6051
  %v6053 = vpop.f32.mrf.mxu0
  %6054 = vdwg.mxu0
  %s6055 = scalar_lea.vmem %s6, 224
  %v6056 = vld [vmem:[%s6055] sm:$0xff]
  %v6057 = vld [vmem:[%s6055 + $0x8] sm:$0xff]
  %v6058 = vld [vmem:[%s6055 + $0x10] sm:$0xff]
  %v6059 = vld [vmem:[%s6055 + $0x18] sm:$0xff]
  %v6061 = vsel %vm458, %v5977, 0
  %v6064 = vsel %vm458, %v5982, 0
  %v6067 = vsel %vm458, %v5987, 0
  %v6070 = vsel %vm458, %v5992, 0
  %v6073 = vsel %vm458, %v5997, 0
  %v6076 = vsel %vm458, %v6002, 0
  %v6079 = vsel %vm458, %v6007, 0
  %v6082 = vsel %vm458, %v6012, 0
  %v6085 = vsel %vm458, %v6017, 0
  %v6088 = vsel %vm458, %v6022, 0
  %v6091 = vsel %vm458, %v6027, 0
  %v6094 = vsel %vm458, %v6032, 0
  %v6097 = vsel %vm458, %v6037, 0
  %v6100 = vsel %vm458, %v6042, 0
  %v6103 = vsel %vm458, %v6047, 0
  %v6106 = vsel %vm458, %v6052, 0
  %6108 = vmatprep.subr.mxu0 0.0
  %6109 = vmatpush1.msra.mxu0 0.0
  %6110 = vmatprep.subr.mxu0 0.0
  %6111 = vmatpush1.msra.mxu0 0.0
  %6112 = vmatprep.subr.mxu0 0.0
  %6113 = vmatpush1.msra.mxu0 0.0
  %6114 = vmatprep.subr.mxu0 0.0
  %6115 = vmatpush1.msra.mxu0 0.0
  %6116 = vmatprep.subr.mxu0 0.0
  %6117 = vmatpush1.msra.mxu0 0.0
  %6118 = vmatprep.subr.mxu0 0.0
  %6119 = vmatpush1.msra.mxu0 0.0
  %6120 = vmatprep.subr.mxu0 0.0
  %6121 = vmatpush1.msra.mxu0 0.0
  %6122 = vmatprep.subr.mxu0 0.0
  %6123 = vmatpush1.msra.mxu0 0.0
  %6124 = vmatprep.subr.mxu0 0.0
  %6125 = vmatpush1.msra.mxu0 0.0
  %6126 = vmatprep.subr.mxu0 0.0
  %6127 = vmatpush1.msra.mxu0 0.0
  %6128 = vmatprep.subr.mxu0 0.0
  %6129 = vmatpush1.msra.mxu0 0.0
  %6130 = vmatprep.subr.mxu0 0.0
  %6131 = vmatpush1.msra.mxu0 0.0
  %6132 = vmatprep.subr.mxu0 0.0
  %6133 = vmatpush1.msra.mxu0 %v6059
  %6134 = vmatprep.subr.mxu0 0.0
  %6135 = vmatpush1.msra.mxu0 %v6058
  %6136 = vmatprep.subr.mxu0 0.0
  %6137 = vmatpush1.msra.mxu0 %v6057
  %6138 = vmatprep.subr.mxu0 0.0
  %6139 = vmatpush1.msra.mxu0 %v6056
  %6140 = vmatprep.subr.mxu0 0.0
  %6141 = vmatpush2.msra.mxu0 0.0
  %6142 = vmatprep.subr.mxu0 0.0
  %6143 = vmatpush2.msra.mxu0 0.0
  %6144 = vmatprep.subr.mxu0 0.0
  %6145 = vmatpush2.msra.mxu0 0.0
  %6146 = vmatprep.subr.mxu0 0.0
  %6147 = vmatpush2.msra.mxu0 0.0
  %6148 = vmatprep.subr.mxu0 0.0
  %6149 = vmatpush2.msra.mxu0 0.0
  %6150 = vmatprep.subr.mxu0 0.0
  %6151 = vmatpush2.msra.mxu0 0.0
  %6152 = vmatprep.subr.mxu0 0.0
  %6153 = vmatpush2.msra.mxu0 0.0
  %6154 = vmatprep.subr.mxu0 0.0
  %6155 = vmatpush2.msra.mxu0 0.0
  %6156 = vmatprep.subr.mxu0 0.0
  %6157 = vmatpush2.msra.mxu0 0.0
  %6158 = vmatprep.subr.mxu0 0.0
  %6159 = vmatpush2.msra.mxu0 0.0
  %6160 = vmatprep.subr.mxu0 0.0
  %6161 = vmatpush2.msra.mxu0 0.0
  %6162 = vmatprep.subr.mxu0 0.0
  %6163 = vmatpush2.msra.mxu0 0.0
  %6164 = vmatprep.subr.mxu0 0.0
  %6165 = vmatpush2.msra.mxu0 0.0
  %6166 = vmatprep.subr.mxu0 0.0
  %6167 = vmatpush2.msra.mxu0 0.0
  %6168 = vmatprep.subr.mxu0 0.0
  %6169 = vmatpush2.msra.mxu0 0.0
  %6170 = vmatprep.subr.mxu0 0.0
  %6171 = vmatpush2.msra.mxu0 0.0
  %6172 = vmatprep.mubr.f32.mxu0 0.0
  %6173 = vmatmul.mubr.f32.gmra.mxu0 %v6061
  %v6174 = vpop.f32.mrf.mxu0
  %v6175 = vadd.f32 0.0, %v6174
  %v6176 = vpop.f32.mrf.mxu0
  %6177 = vmatprep.mubr.f32.mxu0 0.0
  %6178 = vmatmul.mubr.f32.gmra.mxu0 %v6064
  %v6179 = vpop.f32.mrf.mxu0
  %v6180 = vadd.f32 0.0, %v6179
  %v6181 = vpop.f32.mrf.mxu0
  %6182 = vmatprep.mubr.f32.mxu0 0.0
  %6183 = vmatmul.mubr.f32.gmra.mxu0 %v6067
  %v6184 = vpop.f32.mrf.mxu0
  %v6185 = vadd.f32 0.0, %v6184
  %v6186 = vpop.f32.mrf.mxu0
  %6187 = vmatprep.mubr.f32.mxu0 0.0
  %6188 = vmatmul.mubr.f32.gmra.mxu0 %v6070
  %v6189 = vpop.f32.mrf.mxu0
  %v6190 = vadd.f32 0.0, %v6189
  %v6191 = vpop.f32.mrf.mxu0
  %6192 = vmatprep.mubr.f32.mxu0 0.0
  %6193 = vmatmul.mubr.f32.gmra.mxu0 %v6073
  %v6194 = vpop.f32.mrf.mxu0
  %v6195 = vadd.f32 0.0, %v6194
  %v6196 = vpop.f32.mrf.mxu0
  %6197 = vmatprep.mubr.f32.mxu0 0.0
  %6198 = vmatmul.mubr.f32.gmra.mxu0 %v6076
  %v6199 = vpop.f32.mrf.mxu0
  %v6200 = vadd.f32 0.0, %v6199
  %v6201 = vpop.f32.mrf.mxu0
  %6202 = vmatprep.mubr.f32.mxu0 0.0
  %6203 = vmatmul.mubr.f32.gmra.mxu0 %v6079
  %v6204 = vpop.f32.mrf.mxu0
  %v6205 = vadd.f32 0.0, %v6204
  %v6206 = vpop.f32.mrf.mxu0
  %6207 = vmatprep.mubr.f32.mxu0 0.0
  %6208 = vmatmul.mubr.f32.gmra.mxu0 %v6082
  %v6209 = vpop.f32.mrf.mxu0
  %v6210 = vadd.f32 0.0, %v6209
  %v6211 = vpop.f32.mrf.mxu0
  %6212 = vmatprep.mubr.f32.mxu0 0.0
  %6213 = vmatmul.mubr.f32.gmra.mxu0 %v6085
  %v6214 = vpop.f32.mrf.mxu0
  %v6215 = vadd.f32 0.0, %v6214
  %v6216 = vpop.f32.mrf.mxu0
  %6217 = vmatprep.mubr.f32.mxu0 0.0
  %6218 = vmatmul.mubr.f32.gmra.mxu0 %v6088
  %v6219 = vpop.f32.mrf.mxu0
  %v6220 = vadd.f32 0.0, %v6219
  %v6221 = vpop.f32.mrf.mxu0
  %6222 = vmatprep.mubr.f32.mxu0 0.0
  %6223 = vmatmul.mubr.f32.gmra.mxu0 %v6091
  %v6224 = vpop.f32.mrf.mxu0
  %v6225 = vadd.f32 0.0, %v6224
  %v6226 = vpop.f32.mrf.mxu0
  %6227 = vmatprep.mubr.f32.mxu0 0.0
  %6228 = vmatmul.mubr.f32.gmra.mxu0 %v6094
  %v6229 = vpop.f32.mrf.mxu0
  %v6230 = vadd.f32 0.0, %v6229
  %v6231 = vpop.f32.mrf.mxu0
  %6232 = vmatprep.mubr.f32.mxu0 0.0
  %6233 = vmatmul.mubr.f32.gmra.mxu0 %v6097
  %v6234 = vpop.f32.mrf.mxu0
  %v6235 = vadd.f32 0.0, %v6234
  %v6236 = vpop.f32.mrf.mxu0
  %6237 = vmatprep.mubr.f32.mxu0 0.0
  %6238 = vmatmul.mubr.f32.gmra.mxu0 %v6100
  %v6239 = vpop.f32.mrf.mxu0
  %v6240 = vadd.f32 0.0, %v6239
  %v6241 = vpop.f32.mrf.mxu0
  %6242 = vmatprep.mubr.f32.mxu0 0.0
  %6243 = vmatmul.mubr.f32.gmra.mxu0 %v6103
  %v6244 = vpop.f32.mrf.mxu0
  %v6245 = vadd.f32 0.0, %v6244
  %v6246 = vpop.f32.mrf.mxu0
  %6247 = vmatprep.mubr.f32.mxu0 0.0
  %6248 = vmatmul.mubr.f32.gmra.mxu0 %v6106
  %v6249 = vpop.f32.mrf.mxu0
  %v6250 = vadd.f32 0.0, %v6249
  %v6251 = vpop.f32.mrf.mxu0
  %6252 = vdwg.mxu0
  %v6253 = vadd.f32 %v5894, %v6175
  %v6254 = vadd.f32 %v5895, %v6180
  %v6255 = vadd.f32 %v5896, %v6185
  %v6256 = vadd.f32 %v5897, %v6190
  %v6257 = vadd.f32 %v5898, %v6195
  %v6258 = vadd.f32 %v5899, %v6200
  %v6259 = vadd.f32 %v5900, %v6205
  %v6260 = vadd.f32 %v5901, %v6210
  %v6261 = vadd.f32 %v5902, %v6215
  %v6262 = vadd.f32 %v5903, %v6220
  %v6263 = vadd.f32 %v5904, %v6225
  %v6264 = vadd.f32 %v5905, %v6230
  %v6265 = vadd.f32 %v5906, %v6235
  %v6266 = vadd.f32 %v5907, %v6240
  %v6267 = vadd.f32 %v5908, %v6245
  %v6268 = vadd.f32 %v5909, %v6250
  %6269 = vmatprep.subr.mxu0 0.0
  %6270 = vmatpush1.msra.mxu0 %v3535
  %6271 = vmatprep.subr.mxu0 0.0
  %6272 = vmatpush1.msra.mxu0 %v3534
  %6273 = vmatprep.subr.mxu0 0.0
  %6274 = vmatpush1.msra.mxu0 %v3533
  %6275 = vmatprep.subr.mxu0 0.0
  %6276 = vmatpush1.msra.mxu0 %v3532
  %6277 = vmatprep.subr.mxu0 0.0
  %6278 = vmatpush1.msra.mxu0 %v3531
  %6279 = vmatprep.subr.mxu0 0.0
  %6280 = vmatpush1.msra.mxu0 %v3530
  %6281 = vmatprep.subr.mxu0 0.0
  %6282 = vmatpush1.msra.mxu0 %v3529
  %6283 = vmatprep.subr.mxu0 0.0
  %6284 = vmatpush1.msra.mxu0 %v3528
  %6285 = vmatprep.subr.mxu0 0.0
  %6286 = vmatpush1.msra.mxu0 %v3527
  %6287 = vmatprep.subr.mxu0 0.0
  %6288 = vmatpush1.msra.mxu0 %v3526
  %6289 = vmatprep.subr.mxu0 0.0
  %6290 = vmatpush1.msra.mxu0 %v3525
  %6291 = vmatprep.subr.mxu0 0.0
  %6292 = vmatpush1.msra.mxu0 %v3524
  %6293 = vmatprep.subr.mxu0 0.0
  %6294 = vmatpush1.msra.mxu0 %v3523
  %6295 = vmatprep.subr.mxu0 0.0
  %6296 = vmatpush1.msra.mxu0 %v3522
  %6297 = vmatprep.subr.mxu0 0.0
  %6298 = vmatpush1.msra.mxu0 %v3521
  %6299 = vmatprep.subr.mxu0 0.0
  %6300 = vmatpush1.msra.mxu0 %v3520
  %6301 = vmatprep.subr.mxu0 0.0
  %6302 = vmatpush2.msra.mxu0 0.0
  %6303 = vmatprep.subr.mxu0 0.0
  %6304 = vmatpush2.msra.mxu0 0.0
  %6305 = vmatprep.subr.mxu0 0.0
  %6306 = vmatpush2.msra.mxu0 0.0
  %6307 = vmatprep.subr.mxu0 0.0
  %6308 = vmatpush2.msra.mxu0 0.0
  %6309 = vmatprep.subr.mxu0 0.0
  %6310 = vmatpush2.msra.mxu0 0.0
  %6311 = vmatprep.subr.mxu0 0.0
  %6312 = vmatpush2.msra.mxu0 0.0
  %6313 = vmatprep.subr.mxu0 0.0
  %6314 = vmatpush2.msra.mxu0 0.0
  %6315 = vmatprep.subr.mxu0 0.0
  %6316 = vmatpush2.msra.mxu0 0.0
  %6317 = vmatprep.subr.mxu0 0.0
  %6318 = vmatpush2.msra.mxu0 0.0
  %6319 = vmatprep.subr.mxu0 0.0
  %6320 = vmatpush2.msra.mxu0 0.0
  %6321 = vmatprep.subr.mxu0 0.0
  %6322 = vmatpush2.msra.mxu0 0.0
  %6323 = vmatprep.subr.mxu0 0.0
  %6324 = vmatpush2.msra.mxu0 0.0
  %6325 = vmatprep.subr.mxu0 0.0
  %6326 = vmatpush2.msra.mxu0 0.0
  %6327 = vmatprep.subr.mxu0 0.0
  %6328 = vmatpush2.msra.mxu0 0.0
  %6329 = vmatprep.subr.mxu0 0.0
  %6330 = vmatpush2.msra.mxu0 0.0
  %6331 = vmatprep.subr.mxu0 0.0
  %6332 = vmatpush2.msra.mxu0 0.0
  %6333 = vmatprep.mubr.f32.mxu0 0.0
  %6334 = vmatmul.mubr.f32.gmra.mxu0 %v3145
  %v6335 = vpop.f32.mrf.mxu0
  %v6336 = vadd.f32 0.0, %v6335
  %v6337 = vpop.f32.mrf.mxu0
  %6338 = vmatprep.mubr.f32.mxu0 0.0
  %6339 = vmatmul.mubr.f32.gmra.mxu0 %v3146
  %v6340 = vpop.f32.mrf.mxu0
  %v6341 = vadd.f32 0.0, %v6340
  %v6342 = vpop.f32.mrf.mxu0
  %6343 = vmatprep.mubr.f32.mxu0 0.0
  %6344 = vmatmul.mubr.f32.gmra.mxu0 %v3147
  %v6345 = vpop.f32.mrf.mxu0
  %v6346 = vadd.f32 0.0, %v6345
  %v6347 = vpop.f32.mrf.mxu0
  %6348 = vmatprep.mubr.f32.mxu0 0.0
  %6349 = vmatmul.mubr.f32.gmra.mxu0 %v3148
  %v6350 = vpop.f32.mrf.mxu0
  %v6351 = vadd.f32 0.0, %v6350
  %v6352 = vpop.f32.mrf.mxu0
  %6353 = vmatprep.mubr.f32.mxu0 0.0
  %6354 = vmatmul.mubr.f32.gmra.mxu0 %v3149
  %v6355 = vpop.f32.mrf.mxu0
  %v6356 = vadd.f32 0.0, %v6355
  %v6357 = vpop.f32.mrf.mxu0
  %6358 = vmatprep.mubr.f32.mxu0 0.0
  %6359 = vmatmul.mubr.f32.gmra.mxu0 %v3150
  %v6360 = vpop.f32.mrf.mxu0
  %v6361 = vadd.f32 0.0, %v6360
  %v6362 = vpop.f32.mrf.mxu0
  %6363 = vmatprep.mubr.f32.mxu0 0.0
  %6364 = vmatmul.mubr.f32.gmra.mxu0 %v3151
  %v6365 = vpop.f32.mrf.mxu0
  %v6366 = vadd.f32 0.0, %v6365
  %v6367 = vpop.f32.mrf.mxu0
  %6368 = vmatprep.mubr.f32.mxu0 0.0
  %6369 = vmatmul.mubr.f32.gmra.mxu0 %v3152
  %v6370 = vpop.f32.mrf.mxu0
  %v6371 = vadd.f32 0.0, %v6370
  %v6372 = vpop.f32.mrf.mxu0
  %6373 = vmatprep.mubr.f32.mxu0 0.0
  %6374 = vmatmul.mubr.f32.gmra.mxu0 %v3153
  %v6375 = vpop.f32.mrf.mxu0
  %v6376 = vadd.f32 0.0, %v6375
  %v6377 = vpop.f32.mrf.mxu0
  %6378 = vmatprep.mubr.f32.mxu0 0.0
  %6379 = vmatmul.mubr.f32.gmra.mxu0 %v3154
  %v6380 = vpop.f32.mrf.mxu0
  %v6381 = vadd.f32 0.0, %v6380
  %v6382 = vpop.f32.mrf.mxu0
  %6383 = vmatprep.mubr.f32.mxu0 0.0
  %6384 = vmatmul.mubr.f32.gmra.mxu0 %v3155
  %v6385 = vpop.f32.mrf.mxu0
  %v6386 = vadd.f32 0.0, %v6385
  %v6387 = vpop.f32.mrf.mxu0
  %6388 = vmatprep.mubr.f32.mxu0 0.0
  %6389 = vmatmul.mubr.f32.gmra.mxu0 %v3156
  %v6390 = vpop.f32.mrf.mxu0
  %v6391 = vadd.f32 0.0, %v6390
  %v6392 = vpop.f32.mrf.mxu0
  %6393 = vmatprep.mubr.f32.mxu0 0.0
  %6394 = vmatmul.mubr.f32.gmra.mxu0 %v3157
  %v6395 = vpop.f32.mrf.mxu0
  %v6396 = vadd.f32 0.0, %v6395
  %v6397 = vpop.f32.mrf.mxu0
  %6398 = vmatprep.mubr.f32.mxu0 0.0
  %6399 = vmatmul.mubr.f32.gmra.mxu0 %v3158
  %v6400 = vpop.f32.mrf.mxu0
  %v6401 = vadd.f32 0.0, %v6400
  %v6402 = vpop.f32.mrf.mxu0
  %6403 = vmatprep.mubr.f32.mxu0 0.0
  %6404 = vmatmul.mubr.f32.gmra.mxu0 %v3159
  %v6405 = vpop.f32.mrf.mxu0
  %v6406 = vadd.f32 0.0, %v6405
  %v6407 = vpop.f32.mrf.mxu0
  %6408 = vmatprep.mubr.f32.mxu0 0.0
  %6409 = vmatmul.mubr.f32.gmra.mxu0 %v3160
  %v6410 = vpop.f32.mrf.mxu0
  %v6411 = vadd.f32 0.0, %v6410
  %v6412 = vpop.f32.mrf.mxu0
  %6413 = vdwg.mxu0
  %s6414 = scalar_lea.vmem %s6, 256
  %v6415 = vld [vmem:[%s6414] sm:$0xff]
  %v6416 = vld [vmem:[%s6414 + $0x8] sm:$0xff]
  %v6417 = vld [vmem:[%s6414 + $0x10] sm:$0xff]
  %v6418 = vld [vmem:[%s6414 + $0x18] sm:$0xff]
  %v6420 = vsel %vm458, %v6336, 0
  %v6423 = vsel %vm458, %v6341, 0
  %v6426 = vsel %vm458, %v6346, 0
  %v6429 = vsel %vm458, %v6351, 0
  %v6432 = vsel %vm458, %v6356, 0
  %v6435 = vsel %vm458, %v6361, 0
  %v6438 = vsel %vm458, %v6366, 0
  %v6441 = vsel %vm458, %v6371, 0
  %v6444 = vsel %vm458, %v6376, 0
  %v6447 = vsel %vm458, %v6381, 0
  %v6450 = vsel %vm458, %v6386, 0
  %v6453 = vsel %vm458, %v6391, 0
  %v6456 = vsel %vm458, %v6396, 0
  %v6459 = vsel %vm458, %v6401, 0
  %v6462 = vsel %vm458, %v6406, 0
  %v6465 = vsel %vm458, %v6411, 0
  %6467 = vmatprep.subr.mxu0 0.0
  %6468 = vmatpush1.msra.mxu0 0.0
  %6469 = vmatprep.subr.mxu0 0.0
  %6470 = vmatpush1.msra.mxu0 0.0
  %6471 = vmatprep.subr.mxu0 0.0
  %6472 = vmatpush1.msra.mxu0 0.0
  %6473 = vmatprep.subr.mxu0 0.0
  %6474 = vmatpush1.msra.mxu0 0.0
  %6475 = vmatprep.subr.mxu0 0.0
  %6476 = vmatpush1.msra.mxu0 0.0
  %6477 = vmatprep.subr.mxu0 0.0
  %6478 = vmatpush1.msra.mxu0 0.0
  %6479 = vmatprep.subr.mxu0 0.0
  %6480 = vmatpush1.msra.mxu0 0.0
  %6481 = vmatprep.subr.mxu0 0.0
  %6482 = vmatpush1.msra.mxu0 0.0
  %6483 = vmatprep.subr.mxu0 0.0
  %6484 = vmatpush1.msra.mxu0 0.0
  %6485 = vmatprep.subr.mxu0 0.0
  %6486 = vmatpush1.msra.mxu0 0.0
  %6487 = vmatprep.subr.mxu0 0.0
  %6488 = vmatpush1.msra.mxu0 0.0
  %6489 = vmatprep.subr.mxu0 0.0
  %6490 = vmatpush1.msra.mxu0 0.0
  %6491 = vmatprep.subr.mxu0 0.0
  %6492 = vmatpush1.msra.mxu0 %v6418
  %6493 = vmatprep.subr.mxu0 0.0
  %6494 = vmatpush1.msra.mxu0 %v6417
  %6495 = vmatprep.subr.mxu0 0.0
  %6496 = vmatpush1.msra.mxu0 %v6416
  %6497 = vmatprep.subr.mxu0 0.0
  %6498 = vmatpush1.msra.mxu0 %v6415
  %6499 = vmatprep.subr.mxu0 0.0
  %6500 = vmatpush2.msra.mxu0 0.0
  %6501 = vmatprep.subr.mxu0 0.0
  %6502 = vmatpush2.msra.mxu0 0.0
  %6503 = vmatprep.subr.mxu0 0.0
  %6504 = vmatpush2.msra.mxu0 0.0
  %6505 = vmatprep.subr.mxu0 0.0
  %6506 = vmatpush2.msra.mxu0 0.0
  %6507 = vmatprep.subr.mxu0 0.0
  %6508 = vmatpush2.msra.mxu0 0.0
  %6509 = vmatprep.subr.mxu0 0.0
  %6510 = vmatpush2.msra.mxu0 0.0
  %6511 = vmatprep.subr.mxu0 0.0
  %6512 = vmatpush2.msra.mxu0 0.0
  %6513 = vmatprep.subr.mxu0 0.0
  %6514 = vmatpush2.msra.mxu0 0.0
  %6515 = vmatprep.subr.mxu0 0.0
  %6516 = vmatpush2.msra.mxu0 0.0
  %6517 = vmatprep.subr.mxu0 0.0
  %6518 = vmatpush2.msra.mxu0 0.0
  %6519 = vmatprep.subr.mxu0 0.0
  %6520 = vmatpush2.msra.mxu0 0.0
  %6521 = vmatprep.subr.mxu0 0.0
  %6522 = vmatpush2.msra.mxu0 0.0
  %6523 = vmatprep.subr.mxu0 0.0
  %6524 = vmatpush2.msra.mxu0 0.0
  %6525 = vmatprep.subr.mxu0 0.0
  %6526 = vmatpush2.msra.mxu0 0.0
  %6527 = vmatprep.subr.mxu0 0.0
  %6528 = vmatpush2.msra.mxu0 0.0
  %6529 = vmatprep.subr.mxu0 0.0
  %6530 = vmatpush2.msra.mxu0 0.0
  %6531 = vmatprep.mubr.f32.mxu0 0.0
  %6532 = vmatmul.mubr.f32.gmra.mxu0 %v6420
  %v6533 = vpop.f32.mrf.mxu0
  %v6534 = vadd.f32 0.0, %v6533
  %v6535 = vpop.f32.mrf.mxu0
  %6536 = vmatprep.mubr.f32.mxu0 0.0
  %6537 = vmatmul.mubr.f32.gmra.mxu0 %v6423
  %v6538 = vpop.f32.mrf.mxu0
  %v6539 = vadd.f32 0.0, %v6538
  %v6540 = vpop.f32.mrf.mxu0
  %6541 = vmatprep.mubr.f32.mxu0 0.0
  %6542 = vmatmul.mubr.f32.gmra.mxu0 %v6426
  %v6543 = vpop.f32.mrf.mxu0
  %v6544 = vadd.f32 0.0, %v6543
  %v6545 = vpop.f32.mrf.mxu0
  %6546 = vmatprep.mubr.f32.mxu0 0.0
  %6547 = vmatmul.mubr.f32.gmra.mxu0 %v6429
  %v6548 = vpop.f32.mrf.mxu0
  %v6549 = vadd.f32 0.0, %v6548
  %v6550 = vpop.f32.mrf.mxu0
  %6551 = vmatprep.mubr.f32.mxu0 0.0
  %6552 = vmatmul.mubr.f32.gmra.mxu0 %v6432
  %v6553 = vpop.f32.mrf.mxu0
  %v6554 = vadd.f32 0.0, %v6553
  %v6555 = vpop.f32.mrf.mxu0
  %6556 = vmatprep.mubr.f32.mxu0 0.0
  %6557 = vmatmul.mubr.f32.gmra.mxu0 %v6435
  %v6558 = vpop.f32.mrf.mxu0
  %v6559 = vadd.f32 0.0, %v6558
  %v6560 = vpop.f32.mrf.mxu0
  %6561 = vmatprep.mubr.f32.mxu0 0.0
  %6562 = vmatmul.mubr.f32.gmra.mxu0 %v6438
  %v6563 = vpop.f32.mrf.mxu0
  %v6564 = vadd.f32 0.0, %v6563
  %v6565 = vpop.f32.mrf.mxu0
  %6566 = vmatprep.mubr.f32.mxu0 0.0
  %6567 = vmatmul.mubr.f32.gmra.mxu0 %v6441
  %v6568 = vpop.f32.mrf.mxu0
  %v6569 = vadd.f32 0.0, %v6568
  %v6570 = vpop.f32.mrf.mxu0
  %6571 = vmatprep.mubr.f32.mxu0 0.0
  %6572 = vmatmul.mubr.f32.gmra.mxu0 %v6444
  %v6573 = vpop.f32.mrf.mxu0
  %v6574 = vadd.f32 0.0, %v6573
  %v6575 = vpop.f32.mrf.mxu0
  %6576 = vmatprep.mubr.f32.mxu0 0.0
  %6577 = vmatmul.mubr.f32.gmra.mxu0 %v6447
  %v6578 = vpop.f32.mrf.mxu0
  %v6579 = vadd.f32 0.0, %v6578
  %v6580 = vpop.f32.mrf.mxu0
  %6581 = vmatprep.mubr.f32.mxu0 0.0
  %6582 = vmatmul.mubr.f32.gmra.mxu0 %v6450
  %v6583 = vpop.f32.mrf.mxu0
  %v6584 = vadd.f32 0.0, %v6583
  %v6585 = vpop.f32.mrf.mxu0
  %6586 = vmatprep.mubr.f32.mxu0 0.0
  %6587 = vmatmul.mubr.f32.gmra.mxu0 %v6453
  %v6588 = vpop.f32.mrf.mxu0
  %v6589 = vadd.f32 0.0, %v6588
  %v6590 = vpop.f32.mrf.mxu0
  %6591 = vmatprep.mubr.f32.mxu0 0.0
  %6592 = vmatmul.mubr.f32.gmra.mxu0 %v6456
  %v6593 = vpop.f32.mrf.mxu0
  %v6594 = vadd.f32 0.0, %v6593
  %v6595 = vpop.f32.mrf.mxu0
  %6596 = vmatprep.mubr.f32.mxu0 0.0
  %6597 = vmatmul.mubr.f32.gmra.mxu0 %v6459
  %v6598 = vpop.f32.mrf.mxu0
  %v6599 = vadd.f32 0.0, %v6598
  %v6600 = vpop.f32.mrf.mxu0
  %6601 = vmatprep.mubr.f32.mxu0 0.0
  %6602 = vmatmul.mubr.f32.gmra.mxu0 %v6462
  %v6603 = vpop.f32.mrf.mxu0
  %v6604 = vadd.f32 0.0, %v6603
  %v6605 = vpop.f32.mrf.mxu0
  %6606 = vmatprep.mubr.f32.mxu0 0.0
  %6607 = vmatmul.mubr.f32.gmra.mxu0 %v6465
  %v6608 = vpop.f32.mrf.mxu0
  %v6609 = vadd.f32 0.0, %v6608
  %v6610 = vpop.f32.mrf.mxu0
  %6611 = vdwg.mxu0
  %v6612 = vadd.f32 %v6253, %v6534
  %v6613 = vadd.f32 %v6254, %v6539
  %v6614 = vadd.f32 %v6255, %v6544
  %v6615 = vadd.f32 %v6256, %v6549
  %v6616 = vadd.f32 %v6257, %v6554
  %v6617 = vadd.f32 %v6258, %v6559
  %v6618 = vadd.f32 %v6259, %v6564
  %v6619 = vadd.f32 %v6260, %v6569
  %v6620 = vadd.f32 %v6261, %v6574
  %v6621 = vadd.f32 %v6262, %v6579
  %v6622 = vadd.f32 %v6263, %v6584
  %v6623 = vadd.f32 %v6264, %v6589
  %v6624 = vadd.f32 %v6265, %v6594
  %v6625 = vadd.f32 %v6266, %v6599
  %v6626 = vadd.f32 %v6267, %v6604
  %v6627 = vadd.f32 %v6268, %v6609
  %v6628 = vmax.f32 %v6612, 0.0
  %v6629 = vmax.f32 %v6613, 0.0
  %v6630 = vmax.f32 %v6614, 0.0
  %v6631 = vmax.f32 %v6615, 0.0
  %v6632 = vmax.f32 %v6616, 0.0
  %v6633 = vmax.f32 %v6617, 0.0
  %v6634 = vmax.f32 %v6618, 0.0
  %v6635 = vmax.f32 %v6619, 0.0
  %v6636 = vmax.f32 %v6620, 0.0
  %v6637 = vmax.f32 %v6621, 0.0
  %v6638 = vmax.f32 %v6622, 0.0
  %v6639 = vmax.f32 %v6623, 0.0
  %v6640 = vmax.f32 %v6624, 0.0
  %v6641 = vmax.f32 %v6625, 0.0
  %v6642 = vmax.f32 %v6626, 0.0
  %v6643 = vmax.f32 %v6627, 0.0
  %v6644 = vld [vmem:[%s9] sm:$0x1]
  %6645 = vmatprep.subr.mxu0 0.0
  %6646 = vmatpush1.msra.mxu0 %v6643
  %6647 = vmatprep.subr.mxu0 0.0
  %6648 = vmatpush1.msra.mxu0 %v6642
  %6649 = vmatprep.subr.mxu0 0.0
  %6650 = vmatpush1.msra.mxu0 %v6641
  %6651 = vmatprep.subr.mxu0 0.0
  %6652 = vmatpush1.msra.mxu0 %v6640
  %6653 = vmatprep.subr.mxu0 0.0
  %6654 = vmatpush1.msra.mxu0 %v6639
  %6655 = vmatprep.subr.mxu0 0.0
  %6656 = vmatpush1.msra.mxu0 %v6638
  %6657 = vmatprep.subr.mxu0 0.0
  %6658 = vmatpush1.msra.mxu0 %v6637
  %6659 = vmatprep.subr.mxu0 0.0
  %6660 = vmatpush1.msra.mxu0 %v6636
  %6661 = vmatprep.subr.mxu0 0.0
  %6662 = vmatpush1.msra.mxu0 %v6635
  %6663 = vmatprep.subr.mxu0 0.0
  %6664 = vmatpush1.msra.mxu0 %v6634
  %6665 = vmatprep.subr.mxu0 0.0
  %6666 = vmatpush1.msra.mxu0 %v6633
  %6667 = vmatprep.subr.mxu0 0.0
  %6668 = vmatpush1.msra.mxu0 %v6632
  %6669 = vmatprep.subr.mxu0 0.0
  %6670 = vmatpush1.msra.mxu0 %v6631
  %6671 = vmatprep.subr.mxu0 0.0
  %6672 = vmatpush1.msra.mxu0 %v6630
  %6673 = vmatprep.subr.mxu0 0.0
  %6674 = vmatpush1.msra.mxu0 %v6629
  %6675 = vmatprep.subr.mxu0 0.0
  %6676 = vmatpush1.msra.mxu0 %v6628
  %6677 = vmatprep.subr.mxu0 0.0
  %6678 = vmatpush2.msra.mxu0 0.0
  %6679 = vmatprep.subr.mxu0 0.0
  %6680 = vmatpush2.msra.mxu0 0.0
  %6681 = vmatprep.subr.mxu0 0.0
  %6682 = vmatpush2.msra.mxu0 0.0
  %6683 = vmatprep.subr.mxu0 0.0
  %6684 = vmatpush2.msra.mxu0 0.0
  %6685 = vmatprep.subr.mxu0 0.0
  %6686 = vmatpush2.msra.mxu0 0.0
  %6687 = vmatprep.subr.mxu0 0.0
  %6688 = vmatpush2.msra.mxu0 0.0
  %6689 = vmatprep.subr.mxu0 0.0
  %6690 = vmatpush2.msra.mxu0 0.0
  %6691 = vmatprep.subr.mxu0 0.0
  %6692 = vmatpush2.msra.mxu0 0.0
  %6693 = vmatprep.subr.mxu0 0.0
  %6694 = vmatpush2.msra.mxu0 0.0
  %6695 = vmatprep.subr.mxu0 0.0
  %6696 = vmatpush2.msra.mxu0 0.0
  %6697 = vmatprep.subr.mxu0 0.0
  %6698 = vmatpush2.msra.mxu0 0.0
  %6699 = vmatprep.subr.mxu0 0.0
  %6700 = vmatpush2.msra.mxu0 0.0
  %6701 = vmatprep.subr.mxu0 0.0
  %6702 = vmatpush2.msra.mxu0 0.0
  %6703 = vmatprep.subr.mxu0 0.0
  %6704 = vmatpush2.msra.mxu0 0.0
  %6705 = vmatprep.subr.mxu0 0.0
  %6706 = vmatpush2.msra.mxu0 0.0
  %6707 = vmatprep.subr.mxu0 0.0
  %6708 = vmatpush2.msra.mxu0 0.0
  %6709 = vmatprep.mubr.f32.mxu0 0.0
  %6710 = vmatmul.mubr.f32.gmra.mxu0 %v293
  %v6711 = vpop.f32.mrf.mxu0
  %v6712 = vadd.f32 0.0, %v6711
  %v6713 = vpop.f32.mrf.mxu0
  %6714 = vmatprep.mubr.f32.mxu0 0.0
  %6715 = vmatmul.mubr.f32.gmra.mxu0 %v294
  %v6716 = vpop.f32.mrf.mxu0
  %v6717 = vadd.f32 0.0, %v6716
  %v6718 = vpop.f32.mrf.mxu0
  %6719 = vmatprep.mubr.f32.mxu0 0.0
  %6720 = vmatmul.mubr.f32.gmra.mxu0 %v295
  %v6721 = vpop.f32.mrf.mxu0
  %v6722 = vadd.f32 0.0, %v6721
  %v6723 = vpop.f32.mrf.mxu0
  %6724 = vmatprep.mubr.f32.mxu0 0.0
  %6725 = vmatmul.mubr.f32.gmra.mxu0 %v296
  %v6726 = vpop.f32.mrf.mxu0
  %v6727 = vadd.f32 0.0, %v6726
  %v6728 = vpop.f32.mrf.mxu0
  %6729 = vmatprep.mubr.f32.mxu0 0.0
  %6730 = vmatmul.mubr.f32.gmra.mxu0 %v297
  %v6731 = vpop.f32.mrf.mxu0
  %v6732 = vadd.f32 0.0, %v6731
  %v6733 = vpop.f32.mrf.mxu0
  %6734 = vmatprep.mubr.f32.mxu0 0.0
  %6735 = vmatmul.mubr.f32.gmra.mxu0 %v298
  %v6736 = vpop.f32.mrf.mxu0
  %v6737 = vadd.f32 0.0, %v6736
  %v6738 = vpop.f32.mrf.mxu0
  %6739 = vmatprep.mubr.f32.mxu0 0.0
  %6740 = vmatmul.mubr.f32.gmra.mxu0 %v299
  %v6741 = vpop.f32.mrf.mxu0
  %v6742 = vadd.f32 0.0, %v6741
  %v6743 = vpop.f32.mrf.mxu0
  %6744 = vmatprep.mubr.f32.mxu0 0.0
  %6745 = vmatmul.mubr.f32.gmra.mxu0 %v300
  %v6746 = vpop.f32.mrf.mxu0
  %v6747 = vadd.f32 0.0, %v6746
  %v6748 = vpop.f32.mrf.mxu0
  %6749 = vmatprep.mubr.f32.mxu0 0.0
  %6750 = vmatmul.mubr.f32.gmra.mxu0 %v301
  %v6751 = vpop.f32.mrf.mxu0
  %v6752 = vadd.f32 0.0, %v6751
  %v6753 = vpop.f32.mrf.mxu0
  %6754 = vmatprep.mubr.f32.mxu0 0.0
  %6755 = vmatmul.mubr.f32.gmra.mxu0 %v302
  %v6756 = vpop.f32.mrf.mxu0
  %v6757 = vadd.f32 0.0, %v6756
  %v6758 = vpop.f32.mrf.mxu0
  %6759 = vmatprep.mubr.f32.mxu0 0.0
  %6760 = vmatmul.mubr.f32.gmra.mxu0 %v303
  %v6761 = vpop.f32.mrf.mxu0
  %v6762 = vadd.f32 0.0, %v6761
  %v6763 = vpop.f32.mrf.mxu0
  %6764 = vmatprep.mubr.f32.mxu0 0.0
  %6765 = vmatmul.mubr.f32.gmra.mxu0 %v304
  %v6766 = vpop.f32.mrf.mxu0
  %v6767 = vadd.f32 0.0, %v6766
  %v6768 = vpop.f32.mrf.mxu0
  %6769 = vmatprep.mubr.f32.mxu0 0.0
  %6770 = vmatmul.mubr.f32.gmra.mxu0 %v305
  %v6771 = vpop.f32.mrf.mxu0
  %v6772 = vadd.f32 0.0, %v6771
  %v6773 = vpop.f32.mrf.mxu0
  %6774 = vmatprep.mubr.f32.mxu0 0.0
  %6775 = vmatmul.mubr.f32.gmra.mxu0 %v306
  %v6776 = vpop.f32.mrf.mxu0
  %v6777 = vadd.f32 0.0, %v6776
  %v6778 = vpop.f32.mrf.mxu0
  %6779 = vmatprep.mubr.f32.mxu0 0.0
  %6780 = vmatmul.mubr.f32.gmra.mxu0 %v307
  %v6781 = vpop.f32.mrf.mxu0
  %v6782 = vadd.f32 0.0, %v6781
  %v6783 = vpop.f32.mrf.mxu0
  %6784 = vmatprep.mubr.f32.mxu0 0.0
  %6785 = vmatmul.mubr.f32.gmra.mxu0 %v308
  %v6786 = vpop.f32.mrf.mxu0
  %v6787 = vadd.f32 0.0, %v6786
  %v6788 = vpop.f32.mrf.mxu0
  %6789 = vdwg.mxu0
  %v6790 = vld [vmem:[%s8] sm:$0xff]
  %v6791 = vld [vmem:[%s8 + $0x8] sm:$0xff]
  %vm6792 = vcmask 130048
  %v6794 = vsel %vm6792, %v6712, 0
  %v6797 = vsel %vm6792, %v6717, 0
  %v6800 = vsel %vm6792, %v6722, 0
  %v6803 = vsel %vm6792, %v6727, 0
  %v6806 = vsel %vm6792, %v6732, 0
  %v6809 = vsel %vm6792, %v6737, 0
  %v6812 = vsel %vm6792, %v6742, 0
  %v6815 = vsel %vm6792, %v6747, 0
  %v6818 = vsel %vm6792, %v6752, 0
  %v6821 = vsel %vm6792, %v6757, 0
  %v6824 = vsel %vm6792, %v6762, 0
  %v6827 = vsel %vm6792, %v6767, 0
  %v6830 = vsel %vm6792, %v6772, 0
  %v6833 = vsel %vm6792, %v6777, 0
  %v6836 = vsel %vm6792, %v6782, 0
  %v6839 = vsel %vm6792, %v6787, 0
  %6841 = vmatprep.subr.mxu0 0.0
  %6842 = vmatpush1.msra.mxu0 0.0
  %6843 = vmatprep.subr.mxu0 0.0
  %6844 = vmatpush1.msra.mxu0 0.0
  %6845 = vmatprep.subr.mxu0 0.0
  %6846 = vmatpush1.msra.mxu0 0.0
  %6847 = vmatprep.subr.mxu0 0.0
  %6848 = vmatpush1.msra.mxu0 0.0
  %6849 = vmatprep.subr.mxu0 0.0
  %6850 = vmatpush1.msra.mxu0 0.0
  %6851 = vmatprep.subr.mxu0 0.0
  %6852 = vmatpush1.msra.mxu0 0.0
  %6853 = vmatprep.subr.mxu0 0.0
  %6854 = vmatpush1.msra.mxu0 0.0
  %6855 = vmatprep.subr.mxu0 0.0
  %6856 = vmatpush1.msra.mxu0 0.0
  %6857 = vmatprep.subr.mxu0 0.0
  %6858 = vmatpush1.msra.mxu0 0.0
  %6859 = vmatprep.subr.mxu0 0.0
  %6860 = vmatpush1.msra.mxu0 0.0
  %6861 = vmatprep.subr.mxu0 0.0
  %6862 = vmatpush1.msra.mxu0 0.0
  %6863 = vmatprep.subr.mxu0 0.0
  %6864 = vmatpush1.msra.mxu0 0.0
  %6865 = vmatprep.subr.mxu0 0.0
  %6866 = vmatpush1.msra.mxu0 0.0
  %6867 = vmatprep.subr.mxu0 0.0
  %6868 = vmatpush1.msra.mxu0 0.0
  %6869 = vmatprep.subr.mxu0 0.0
  %6870 = vmatpush1.msra.mxu0 %v6791
  %6871 = vmatprep.subr.mxu0 0.0
  %6872 = vmatpush1.msra.mxu0 %v6790
  %6873 = vmatprep.subr.mxu0 0.0
  %6874 = vmatpush2.msra.mxu0 0.0
  %6875 = vmatprep.subr.mxu0 0.0
  %6876 = vmatpush2.msra.mxu0 0.0
  %6877 = vmatprep.subr.mxu0 0.0
  %6878 = vmatpush2.msra.mxu0 0.0
  %6879 = vmatprep.subr.mxu0 0.0
  %6880 = vmatpush2.msra.mxu0 0.0
  %6881 = vmatprep.subr.mxu0 0.0
  %6882 = vmatpush2.msra.mxu0 0.0
  %6883 = vmatprep.subr.mxu0 0.0
  %6884 = vmatpush2.msra.mxu0 0.0
  %6885 = vmatprep.subr.mxu0 0.0
  %6886 = vmatpush2.msra.mxu0 0.0
  %6887 = vmatprep.subr.mxu0 0.0
  %6888 = vmatpush2.msra.mxu0 0.0
  %6889 = vmatprep.subr.mxu0 0.0
  %6890 = vmatpush2.msra.mxu0 0.0
  %6891 = vmatprep.subr.mxu0 0.0
  %6892 = vmatpush2.msra.mxu0 0.0
  %6893 = vmatprep.subr.mxu0 0.0
  %6894 = vmatpush2.msra.mxu0 0.0
  %6895 = vmatprep.subr.mxu0 0.0
  %6896 = vmatpush2.msra.mxu0 0.0
  %6897 = vmatprep.subr.mxu0 0.0
  %6898 = vmatpush2.msra.mxu0 0.0
  %6899 = vmatprep.subr.mxu0 0.0
  %6900 = vmatpush2.msra.mxu0 0.0
  %6901 = vmatprep.subr.mxu0 0.0
  %6902 = vmatpush2.msra.mxu0 0.0
  %6903 = vmatprep.subr.mxu0 0.0
  %6904 = vmatpush2.msra.mxu0 0.0
  %6905 = vmatprep.mubr.f32.mxu0 0.0
  %6906 = vmatmul.mubr.f32.gmra.mxu0 %v6794
  %v6907 = vpop.f32.mrf.mxu0
  %v6908 = vadd.f32 0.0, %v6907
  %v6909 = vpop.f32.mrf.mxu0
  %6910 = vmatprep.mubr.f32.mxu0 0.0
  %6911 = vmatmul.mubr.f32.gmra.mxu0 %v6797
  %v6912 = vpop.f32.mrf.mxu0
  %v6913 = vadd.f32 0.0, %v6912
  %v6914 = vpop.f32.mrf.mxu0
  %6915 = vmatprep.mubr.f32.mxu0 0.0
  %6916 = vmatmul.mubr.f32.gmra.mxu0 %v6800
  %v6917 = vpop.f32.mrf.mxu0
  %v6918 = vadd.f32 0.0, %v6917
  %v6919 = vpop.f32.mrf.mxu0
  %6920 = vmatprep.mubr.f32.mxu0 0.0
  %6921 = vmatmul.mubr.f32.gmra.mxu0 %v6803
  %v6922 = vpop.f32.mrf.mxu0
  %v6923 = vadd.f32 0.0, %v6922
  %v6924 = vpop.f32.mrf.mxu0
  %6925 = vmatprep.mubr.f32.mxu0 0.0
  %6926 = vmatmul.mubr.f32.gmra.mxu0 %v6806
  %v6927 = vpop.f32.mrf.mxu0
  %v6928 = vadd.f32 0.0, %v6927
  %v6929 = vpop.f32.mrf.mxu0
  %6930 = vmatprep.mubr.f32.mxu0 0.0
  %6931 = vmatmul.mubr.f32.gmra.mxu0 %v6809
  %v6932 = vpop.f32.mrf.mxu0
  %v6933 = vadd.f32 0.0, %v6932
  %v6934 = vpop.f32.mrf.mxu0
  %6935 = vmatprep.mubr.f32.mxu0 0.0
  %6936 = vmatmul.mubr.f32.gmra.mxu0 %v6812
  %v6937 = vpop.f32.mrf.mxu0
  %v6938 = vadd.f32 0.0, %v6937
  %v6939 = vpop.f32.mrf.mxu0
  %6940 = vmatprep.mubr.f32.mxu0 0.0
  %6941 = vmatmul.mubr.f32.gmra.mxu0 %v6815
  %v6942 = vpop.f32.mrf.mxu0
  %v6943 = vadd.f32 0.0, %v6942
  %v6944 = vpop.f32.mrf.mxu0
  %6945 = vmatprep.mubr.f32.mxu0 0.0
  %6946 = vmatmul.mubr.f32.gmra.mxu0 %v6818
  %v6947 = vpop.f32.mrf.mxu0
  %v6948 = vadd.f32 0.0, %v6947
  %v6949 = vpop.f32.mrf.mxu0
  %6950 = vmatprep.mubr.f32.mxu0 0.0
  %6951 = vmatmul.mubr.f32.gmra.mxu0 %v6821
  %v6952 = vpop.f32.mrf.mxu0
  %v6953 = vadd.f32 0.0, %v6952
  %v6954 = vpop.f32.mrf.mxu0
  %6955 = vmatprep.mubr.f32.mxu0 0.0
  %6956 = vmatmul.mubr.f32.gmra.mxu0 %v6824
  %v6957 = vpop.f32.mrf.mxu0
  %v6958 = vadd.f32 0.0, %v6957
  %v6959 = vpop.f32.mrf.mxu0
  %6960 = vmatprep.mubr.f32.mxu0 0.0
  %6961 = vmatmul.mubr.f32.gmra.mxu0 %v6827
  %v6962 = vpop.f32.mrf.mxu0
  %v6963 = vadd.f32 0.0, %v6962
  %v6964 = vpop.f32.mrf.mxu0
  %6965 = vmatprep.mubr.f32.mxu0 0.0
  %6966 = vmatmul.mubr.f32.gmra.mxu0 %v6830
  %v6967 = vpop.f32.mrf.mxu0
  %v6968 = vadd.f32 0.0, %v6967
  %v6969 = vpop.f32.mrf.mxu0
  %6970 = vmatprep.mubr.f32.mxu0 0.0
  %6971 = vmatmul.mubr.f32.gmra.mxu0 %v6833
  %v6972 = vpop.f32.mrf.mxu0
  %v6973 = vadd.f32 0.0, %v6972
  %v6974 = vpop.f32.mrf.mxu0
  %6975 = vmatprep.mubr.f32.mxu0 0.0
  %6976 = vmatmul.mubr.f32.gmra.mxu0 %v6836
  %v6977 = vpop.f32.mrf.mxu0
  %v6978 = vadd.f32 0.0, %v6977
  %v6979 = vpop.f32.mrf.mxu0
  %6980 = vmatprep.mubr.f32.mxu0 0.0
  %6981 = vmatmul.mubr.f32.gmra.mxu0 %v6839
  %v6982 = vpop.f32.mrf.mxu0
  %v6983 = vadd.f32 0.0, %v6982
  %v6984 = vpop.f32.mrf.mxu0
  %6985 = vdwg.mxu0
  %v6987 = vlaneseq
  %v6988 = vshrl.u32 %v6987, 7
  %v6989 = vsub.s32 0, %v6988
  %v6990 = vrot.slane %v6644, %v6989
  %v6992 = vadd.f32 %v6990, %v6908
  %v6993 = vadd.f32 %v6990, %v6913
  %v6994 = vadd.f32 %v6990, %v6918
  %v6995 = vadd.f32 %v6990, %v6923
  %v6996 = vadd.f32 %v6990, %v6928
  %v6997 = vadd.f32 %v6990, %v6933
  %v6998 = vadd.f32 %v6990, %v6938
  %v6999 = vadd.f32 %v6990, %v6943
  %v7000 = vadd.f32 %v6990, %v6948
  %v7001 = vadd.f32 %v6990, %v6953
  %v7002 = vadd.f32 %v6990, %v6958
  %v7003 = vadd.f32 %v6990, %v6963
  %v7004 = vadd.f32 %v6990, %v6968
  %v7005 = vadd.f32 %v6990, %v6973
  %v7006 = vadd.f32 %v6990, %v6978
  %v7007 = vadd.f32 %v6990, %v6983
  %7008 = vmatprep.subr.mxu0 0.0
  %7009 = vmatpush1.msra.mxu0 %v6643
  %7010 = vmatprep.subr.mxu0 0.0
  %7011 = vmatpush1.msra.mxu0 %v6642
  %7012 = vmatprep.subr.mxu0 0.0
  %7013 = vmatpush1.msra.mxu0 %v6641
  %7014 = vmatprep.subr.mxu0 0.0
  %7015 = vmatpush1.msra.mxu0 %v6640
  %7016 = vmatprep.subr.mxu0 0.0
  %7017 = vmatpush1.msra.mxu0 %v6639
  %7018 = vmatprep.subr.mxu0 0.0
  %7019 = vmatpush1.msra.mxu0 %v6638
  %7020 = vmatprep.subr.mxu0 0.0
  %7021 = vmatpush1.msra.mxu0 %v6637
  %7022 = vmatprep.subr.mxu0 0.0
  %7023 = vmatpush1.msra.mxu0 %v6636
  %7024 = vmatprep.subr.mxu0 0.0
  %7025 = vmatpush1.msra.mxu0 %v6635
  %7026 = vmatprep.subr.mxu0 0.0
  %7027 = vmatpush1.msra.mxu0 %v6634
  %7028 = vmatprep.subr.mxu0 0.0
  %7029 = vmatpush1.msra.mxu0 %v6633
  %7030 = vmatprep.subr.mxu0 0.0
  %7031 = vmatpush1.msra.mxu0 %v6632
  %7032 = vmatprep.subr.mxu0 0.0
  %7033 = vmatpush1.msra.mxu0 %v6631
  %7034 = vmatprep.subr.mxu0 0.0
  %7035 = vmatpush1.msra.mxu0 %v6630
  %7036 = vmatprep.subr.mxu0 0.0
  %7037 = vmatpush1.msra.mxu0 %v6629
  %7038 = vmatprep.subr.mxu0 0.0
  %7039 = vmatpush1.msra.mxu0 %v6628
  %7040 = vmatprep.subr.mxu0 0.0
  %7041 = vmatpush2.msra.mxu0 0.0
  %7042 = vmatprep.subr.mxu0 0.0
  %7043 = vmatpush2.msra.mxu0 0.0
  %7044 = vmatprep.subr.mxu0 0.0
  %7045 = vmatpush2.msra.mxu0 0.0
  %7046 = vmatprep.subr.mxu0 0.0
  %7047 = vmatpush2.msra.mxu0 0.0
  %7048 = vmatprep.subr.mxu0 0.0
  %7049 = vmatpush2.msra.mxu0 0.0
  %7050 = vmatprep.subr.mxu0 0.0
  %7051 = vmatpush2.msra.mxu0 0.0
  %7052 = vmatprep.subr.mxu0 0.0
  %7053 = vmatpush2.msra.mxu0 0.0
  %7054 = vmatprep.subr.mxu0 0.0
  %7055 = vmatpush2.msra.mxu0 0.0
  %7056 = vmatprep.subr.mxu0 0.0
  %7057 = vmatpush2.msra.mxu0 0.0
  %7058 = vmatprep.subr.mxu0 0.0
  %7059 = vmatpush2.msra.mxu0 0.0
  %7060 = vmatprep.subr.mxu0 0.0
  %7061 = vmatpush2.msra.mxu0 0.0
  %7062 = vmatprep.subr.mxu0 0.0
  %7063 = vmatpush2.msra.mxu0 0.0
  %7064 = vmatprep.subr.mxu0 0.0
  %7065 = vmatpush2.msra.mxu0 0.0
  %7066 = vmatprep.subr.mxu0 0.0
  %7067 = vmatpush2.msra.mxu0 0.0
  %7068 = vmatprep.subr.mxu0 0.0
  %7069 = vmatpush2.msra.mxu0 0.0
  %7070 = vmatprep.subr.mxu0 0.0
  %7071 = vmatpush2.msra.mxu0 0.0
  %7072 = vmatprep.mubr.f32.mxu0 0.0
  %7073 = vmatmul.mubr.f32.gmra.mxu0 %v675
  %v7074 = vpop.f32.mrf.mxu0
  %v7075 = vadd.f32 0.0, %v7074
  %v7076 = vpop.f32.mrf.mxu0
  %7077 = vmatprep.mubr.f32.mxu0 0.0
  %7078 = vmatmul.mubr.f32.gmra.mxu0 %v676
  %v7079 = vpop.f32.mrf.mxu0
  %v7080 = vadd.f32 0.0, %v7079
  %v7081 = vpop.f32.mrf.mxu0
  %7082 = vmatprep.mubr.f32.mxu0 0.0
  %7083 = vmatmul.mubr.f32.gmra.mxu0 %v677
  %v7084 = vpop.f32.mrf.mxu0
  %v7085 = vadd.f32 0.0, %v7084
  %v7086 = vpop.f32.mrf.mxu0
  %7087 = vmatprep.mubr.f32.mxu0 0.0
  %7088 = vmatmul.mubr.f32.gmra.mxu0 %v678
  %v7089 = vpop.f32.mrf.mxu0
  %v7090 = vadd.f32 0.0, %v7089
  %v7091 = vpop.f32.mrf.mxu0
  %7092 = vmatprep.mubr.f32.mxu0 0.0
  %7093 = vmatmul.mubr.f32.gmra.mxu0 %v679
  %v7094 = vpop.f32.mrf.mxu0
  %v7095 = vadd.f32 0.0, %v7094
  %v7096 = vpop.f32.mrf.mxu0
  %7097 = vmatprep.mubr.f32.mxu0 0.0
  %7098 = vmatmul.mubr.f32.gmra.mxu0 %v680
  %v7099 = vpop.f32.mrf.mxu0
  %v7100 = vadd.f32 0.0, %v7099
  %v7101 = vpop.f32.mrf.mxu0
  %7102 = vmatprep.mubr.f32.mxu0 0.0
  %7103 = vmatmul.mubr.f32.gmra.mxu0 %v681
  %v7104 = vpop.f32.mrf.mxu0
  %v7105 = vadd.f32 0.0, %v7104
  %v7106 = vpop.f32.mrf.mxu0
  %7107 = vmatprep.mubr.f32.mxu0 0.0
  %7108 = vmatmul.mubr.f32.gmra.mxu0 %v682
  %v7109 = vpop.f32.mrf.mxu0
  %v7110 = vadd.f32 0.0, %v7109
  %v7111 = vpop.f32.mrf.mxu0
  %7112 = vmatprep.mubr.f32.mxu0 0.0
  %7113 = vmatmul.mubr.f32.gmra.mxu0 %v683
  %v7114 = vpop.f32.mrf.mxu0
  %v7115 = vadd.f32 0.0, %v7114
  %v7116 = vpop.f32.mrf.mxu0
  %7117 = vmatprep.mubr.f32.mxu0 0.0
  %7118 = vmatmul.mubr.f32.gmra.mxu0 %v684
  %v7119 = vpop.f32.mrf.mxu0
  %v7120 = vadd.f32 0.0, %v7119
  %v7121 = vpop.f32.mrf.mxu0
  %7122 = vmatprep.mubr.f32.mxu0 0.0
  %7123 = vmatmul.mubr.f32.gmra.mxu0 %v685
  %v7124 = vpop.f32.mrf.mxu0
  %v7125 = vadd.f32 0.0, %v7124
  %v7126 = vpop.f32.mrf.mxu0
  %7127 = vmatprep.mubr.f32.mxu0 0.0
  %7128 = vmatmul.mubr.f32.gmra.mxu0 %v686
  %v7129 = vpop.f32.mrf.mxu0
  %v7130 = vadd.f32 0.0, %v7129
  %v7131 = vpop.f32.mrf.mxu0
  %7132 = vmatprep.mubr.f32.mxu0 0.0
  %7133 = vmatmul.mubr.f32.gmra.mxu0 %v687
  %v7134 = vpop.f32.mrf.mxu0
  %v7135 = vadd.f32 0.0, %v7134
  %v7136 = vpop.f32.mrf.mxu0
  %7137 = vmatprep.mubr.f32.mxu0 0.0
  %7138 = vmatmul.mubr.f32.gmra.mxu0 %v688
  %v7139 = vpop.f32.mrf.mxu0
  %v7140 = vadd.f32 0.0, %v7139
  %v7141 = vpop.f32.mrf.mxu0
  %7142 = vmatprep.mubr.f32.mxu0 0.0
  %7143 = vmatmul.mubr.f32.gmra.mxu0 %v689
  %v7144 = vpop.f32.mrf.mxu0
  %v7145 = vadd.f32 0.0, %v7144
  %v7146 = vpop.f32.mrf.mxu0
  %7147 = vmatprep.mubr.f32.mxu0 0.0
  %7148 = vmatmul.mubr.f32.gmra.mxu0 %v690
  %v7149 = vpop.f32.mrf.mxu0
  %v7150 = vadd.f32 0.0, %v7149
  %v7151 = vpop.f32.mrf.mxu0
  %7152 = vdwg.mxu0
  %s7153 = scalar_lea.vmem %s8, 16
  %v7154 = vld [vmem:[%s7153] sm:$0xff]
  %v7155 = vld [vmem:[%s7153 + $0x8] sm:$0xff]
  %v7157 = vsel %vm6792, %v7075, 0
  %v7160 = vsel %vm6792, %v7080, 0
  %v7163 = vsel %vm6792, %v7085, 0
  %v7166 = vsel %vm6792, %v7090, 0
  %v7169 = vsel %vm6792, %v7095, 0
  %v7172 = vsel %vm6792, %v7100, 0
  %v7175 = vsel %vm6792, %v7105, 0
  %v7178 = vsel %vm6792, %v7110, 0
  %v7181 = vsel %vm6792, %v7115, 0
  %v7184 = vsel %vm6792, %v7120, 0
  %v7187 = vsel %vm6792, %v7125, 0
  %v7190 = vsel %vm6792, %v7130, 0
  %v7193 = vsel %vm6792, %v7135, 0
  %v7196 = vsel %vm6792, %v7140, 0
  %v7199 = vsel %vm6792, %v7145, 0
  %v7202 = vsel %vm6792, %v7150, 0
  %7204 = vmatprep.subr.mxu0 0.0
  %7205 = vmatpush1.msra.mxu0 0.0
  %7206 = vmatprep.subr.mxu0 0.0
  %7207 = vmatpush1.msra.mxu0 0.0
  %7208 = vmatprep.subr.mxu0 0.0
  %7209 = vmatpush1.msra.mxu0 0.0
  %7210 = vmatprep.subr.mxu0 0.0
  %7211 = vmatpush1.msra.mxu0 0.0
  %7212 = vmatprep.subr.mxu0 0.0
  %7213 = vmatpush1.msra.mxu0 0.0
  %7214 = vmatprep.subr.mxu0 0.0
  %7215 = vmatpush1.msra.mxu0 0.0
  %7216 = vmatprep.subr.mxu0 0.0
  %7217 = vmatpush1.msra.mxu0 0.0
  %7218 = vmatprep.subr.mxu0 0.0
  %7219 = vmatpush1.msra.mxu0 0.0
  %7220 = vmatprep.subr.mxu0 0.0
  %7221 = vmatpush1.msra.mxu0 0.0
  %7222 = vmatprep.subr.mxu0 0.0
  %7223 = vmatpush1.msra.mxu0 0.0
  %7224 = vmatprep.subr.mxu0 0.0
  %7225 = vmatpush1.msra.mxu0 0.0
  %7226 = vmatprep.subr.mxu0 0.0
  %7227 = vmatpush1.msra.mxu0 0.0
  %7228 = vmatprep.subr.mxu0 0.0
  %7229 = vmatpush1.msra.mxu0 0.0
  %7230 = vmatprep.subr.mxu0 0.0
  %7231 = vmatpush1.msra.mxu0 0.0
  %7232 = vmatprep.subr.mxu0 0.0
  %7233 = vmatpush1.msra.mxu0 %v7155
  %7234 = vmatprep.subr.mxu0 0.0
  %7235 = vmatpush1.msra.mxu0 %v7154
  %7236 = vmatprep.subr.mxu0 0.0
  %7237 = vmatpush2.msra.mxu0 0.0
  %7238 = vmatprep.subr.mxu0 0.0
  %7239 = vmatpush2.msra.mxu0 0.0
  %7240 = vmatprep.subr.mxu0 0.0
  %7241 = vmatpush2.msra.mxu0 0.0
  %7242 = vmatprep.subr.mxu0 0.0
  %7243 = vmatpush2.msra.mxu0 0.0
  %7244 = vmatprep.subr.mxu0 0.0
  %7245 = vmatpush2.msra.mxu0 0.0
  %7246 = vmatprep.subr.mxu0 0.0
  %7247 = vmatpush2.msra.mxu0 0.0
  %7248 = vmatprep.subr.mxu0 0.0
  %7249 = vmatpush2.msra.mxu0 0.0
  %7250 = vmatprep.subr.mxu0 0.0
  %7251 = vmatpush2.msra.mxu0 0.0
  %7252 = vmatprep.subr.mxu0 0.0
  %7253 = vmatpush2.msra.mxu0 0.0
  %7254 = vmatprep.subr.mxu0 0.0
  %7255 = vmatpush2.msra.mxu0 0.0
  %7256 = vmatprep.subr.mxu0 0.0
  %7257 = vmatpush2.msra.mxu0 0.0
  %7258 = vmatprep.subr.mxu0 0.0
  %7259 = vmatpush2.msra.mxu0 0.0
  %7260 = vmatprep.subr.mxu0 0.0
  %7261 = vmatpush2.msra.mxu0 0.0
  %7262 = vmatprep.subr.mxu0 0.0
  %7263 = vmatpush2.msra.mxu0 0.0
  %7264 = vmatprep.subr.mxu0 0.0
  %7265 = vmatpush2.msra.mxu0 0.0
  %7266 = vmatprep.subr.mxu0 0.0
  %7267 = vmatpush2.msra.mxu0 0.0
  %7268 = vmatprep.mubr.f32.mxu0 0.0
  %7269 = vmatmul.mubr.f32.gmra.mxu0 %v7157
  %v7270 = vpop.f32.mrf.mxu0
  %v7271 = vadd.f32 0.0, %v7270
  %v7272 = vpop.f32.mrf.mxu0
  %7273 = vmatprep.mubr.f32.mxu0 0.0
  %7274 = vmatmul.mubr.f32.gmra.mxu0 %v7160
  %v7275 = vpop.f32.mrf.mxu0
  %v7276 = vadd.f32 0.0, %v7275
  %v7277 = vpop.f32.mrf.mxu0
  %7278 = vmatprep.mubr.f32.mxu0 0.0
  %7279 = vmatmul.mubr.f32.gmra.mxu0 %v7163
  %v7280 = vpop.f32.mrf.mxu0
  %v7281 = vadd.f32 0.0, %v7280
  %v7282 = vpop.f32.mrf.mxu0
  %7283 = vmatprep.mubr.f32.mxu0 0.0
  %7284 = vmatmul.mubr.f32.gmra.mxu0 %v7166
  %v7285 = vpop.f32.mrf.mxu0
  %v7286 = vadd.f32 0.0, %v7285
  %v7287 = vpop.f32.mrf.mxu0
  %7288 = vmatprep.mubr.f32.mxu0 0.0
  %7289 = vmatmul.mubr.f32.gmra.mxu0 %v7169
  %v7290 = vpop.f32.mrf.mxu0
  %v7291 = vadd.f32 0.0, %v7290
  %v7292 = vpop.f32.mrf.mxu0
  %7293 = vmatprep.mubr.f32.mxu0 0.0
  %7294 = vmatmul.mubr.f32.gmra.mxu0 %v7172
  %v7295 = vpop.f32.mrf.mxu0
  %v7296 = vadd.f32 0.0, %v7295
  %v7297 = vpop.f32.mrf.mxu0
  %7298 = vmatprep.mubr.f32.mxu0 0.0
  %7299 = vmatmul.mubr.f32.gmra.mxu0 %v7175
  %v7300 = vpop.f32.mrf.mxu0
  %v7301 = vadd.f32 0.0, %v7300
  %v7302 = vpop.f32.mrf.mxu0
  %7303 = vmatprep.mubr.f32.mxu0 0.0
  %7304 = vmatmul.mubr.f32.gmra.mxu0 %v7178
  %v7305 = vpop.f32.mrf.mxu0
  %v7306 = vadd.f32 0.0, %v7305
  %v7307 = vpop.f32.mrf.mxu0
  %7308 = vmatprep.mubr.f32.mxu0 0.0
  %7309 = vmatmul.mubr.f32.gmra.mxu0 %v7181
  %v7310 = vpop.f32.mrf.mxu0
  %v7311 = vadd.f32 0.0, %v7310
  %v7312 = vpop.f32.mrf.mxu0
  %7313 = vmatprep.mubr.f32.mxu0 0.0
  %7314 = vmatmul.mubr.f32.gmra.mxu0 %v7184
  %v7315 = vpop.f32.mrf.mxu0
  %v7316 = vadd.f32 0.0, %v7315
  %v7317 = vpop.f32.mrf.mxu0
  %7318 = vmatprep.mubr.f32.mxu0 0.0
  %7319 = vmatmul.mubr.f32.gmra.mxu0 %v7187
  %v7320 = vpop.f32.mrf.mxu0
  %v7321 = vadd.f32 0.0, %v7320
  %v7322 = vpop.f32.mrf.mxu0
  %7323 = vmatprep.mubr.f32.mxu0 0.0
  %7324 = vmatmul.mubr.f32.gmra.mxu0 %v7190
  %v7325 = vpop.f32.mrf.mxu0
  %v7326 = vadd.f32 0.0, %v7325
  %v7327 = vpop.f32.mrf.mxu0
  %7328 = vmatprep.mubr.f32.mxu0 0.0
  %7329 = vmatmul.mubr.f32.gmra.mxu0 %v7193
  %v7330 = vpop.f32.mrf.mxu0
  %v7331 = vadd.f32 0.0, %v7330
  %v7332 = vpop.f32.mrf.mxu0
  %7333 = vmatprep.mubr.f32.mxu0 0.0
  %7334 = vmatmul.mubr.f32.gmra.mxu0 %v7196
  %v7335 = vpop.f32.mrf.mxu0
  %v7336 = vadd.f32 0.0, %v7335
  %v7337 = vpop.f32.mrf.mxu0
  %7338 = vmatprep.mubr.f32.mxu0 0.0
  %7339 = vmatmul.mubr.f32.gmra.mxu0 %v7199
  %v7340 = vpop.f32.mrf.mxu0
  %v7341 = vadd.f32 0.0, %v7340
  %v7342 = vpop.f32.mrf.mxu0
  %7343 = vmatprep.mubr.f32.mxu0 0.0
  %7344 = vmatmul.mubr.f32.gmra.mxu0 %v7202
  %v7345 = vpop.f32.mrf.mxu0
  %v7346 = vadd.f32 0.0, %v7345
  %v7347 = vpop.f32.mrf.mxu0
  %7348 = vdwg.mxu0
  %v7349 = vadd.f32 %v6992, %v7271
  %v7350 = vadd.f32 %v6993, %v7276
  %v7351 = vadd.f32 %v6994, %v7281
  %v7352 = vadd.f32 %v6995, %v7286
  %v7353 = vadd.f32 %v6996, %v7291
  %v7354 = vadd.f32 %v6997, %v7296
  %v7355 = vadd.f32 %v6998, %v7301
  %v7356 = vadd.f32 %v6999, %v7306
  %v7357 = vadd.f32 %v7000, %v7311
  %v7358 = vadd.f32 %v7001, %v7316
  %v7359 = vadd.f32 %v7002, %v7321
  %v7360 = vadd.f32 %v7003, %v7326
  %v7361 = vadd.f32 %v7004, %v7331
  %v7362 = vadd.f32 %v7005, %v7336
  %v7363 = vadd.f32 %v7006, %v7341
  %v7364 = vadd.f32 %v7007, %v7346
  %7365 = vmatprep.subr.mxu0 0.0
  %7366 = vmatpush1.msra.mxu0 %v6643
  %7367 = vmatprep.subr.mxu0 0.0
  %7368 = vmatpush1.msra.mxu0 %v6642
  %7369 = vmatprep.subr.mxu0 0.0
  %7370 = vmatpush1.msra.mxu0 %v6641
  %7371 = vmatprep.subr.mxu0 0.0
  %7372 = vmatpush1.msra.mxu0 %v6640
  %7373 = vmatprep.subr.mxu0 0.0
  %7374 = vmatpush1.msra.mxu0 %v6639
  %7375 = vmatprep.subr.mxu0 0.0
  %7376 = vmatpush1.msra.mxu0 %v6638
  %7377 = vmatprep.subr.mxu0 0.0
  %7378 = vmatpush1.msra.mxu0 %v6637
  %7379 = vmatprep.subr.mxu0 0.0
  %7380 = vmatpush1.msra.mxu0 %v6636
  %7381 = vmatprep.subr.mxu0 0.0
  %7382 = vmatpush1.msra.mxu0 %v6635
  %7383 = vmatprep.subr.mxu0 0.0
  %7384 = vmatpush1.msra.mxu0 %v6634
  %7385 = vmatprep.subr.mxu0 0.0
  %7386 = vmatpush1.msra.mxu0 %v6633
  %7387 = vmatprep.subr.mxu0 0.0
  %7388 = vmatpush1.msra.mxu0 %v6632
  %7389 = vmatprep.subr.mxu0 0.0
  %7390 = vmatpush1.msra.mxu0 %v6631
  %7391 = vmatprep.subr.mxu0 0.0
  %7392 = vmatpush1.msra.mxu0 %v6630
  %7393 = vmatprep.subr.mxu0 0.0
  %7394 = vmatpush1.msra.mxu0 %v6629
  %7395 = vmatprep.subr.mxu0 0.0
  %7396 = vmatpush1.msra.mxu0 %v6628
  %7397 = vmatprep.subr.mxu0 0.0
  %7398 = vmatpush2.msra.mxu0 0.0
  %7399 = vmatprep.subr.mxu0 0.0
  %7400 = vmatpush2.msra.mxu0 0.0
  %7401 = vmatprep.subr.mxu0 0.0
  %7402 = vmatpush2.msra.mxu0 0.0
  %7403 = vmatprep.subr.mxu0 0.0
  %7404 = vmatpush2.msra.mxu0 0.0
  %7405 = vmatprep.subr.mxu0 0.0
  %7406 = vmatpush2.msra.mxu0 0.0
  %7407 = vmatprep.subr.mxu0 0.0
  %7408 = vmatpush2.msra.mxu0 0.0
  %7409 = vmatprep.subr.mxu0 0.0
  %7410 = vmatpush2.msra.mxu0 0.0
  %7411 = vmatprep.subr.mxu0 0.0
  %7412 = vmatpush2.msra.mxu0 0.0
  %7413 = vmatprep.subr.mxu0 0.0
  %7414 = vmatpush2.msra.mxu0 0.0
  %7415 = vmatprep.subr.mxu0 0.0
  %7416 = vmatpush2.msra.mxu0 0.0
  %7417 = vmatprep.subr.mxu0 0.0
  %7418 = vmatpush2.msra.mxu0 0.0
  %7419 = vmatprep.subr.mxu0 0.0
  %7420 = vmatpush2.msra.mxu0 0.0
  %7421 = vmatprep.subr.mxu0 0.0
  %7422 = vmatpush2.msra.mxu0 0.0
  %7423 = vmatprep.subr.mxu0 0.0
  %7424 = vmatpush2.msra.mxu0 0.0
  %7425 = vmatprep.subr.mxu0 0.0
  %7426 = vmatpush2.msra.mxu0 0.0
  %7427 = vmatprep.subr.mxu0 0.0
  %7428 = vmatpush2.msra.mxu0 0.0
  %7429 = vmatprep.mubr.f32.mxu0 0.0
  %7430 = vmatmul.mubr.f32.gmra.mxu0 %v1051
  %v7431 = vpop.f32.mrf.mxu0
  %v7432 = vadd.f32 0.0, %v7431
  %v7433 = vpop.f32.mrf.mxu0
  %7434 = vmatprep.mubr.f32.mxu0 0.0
  %7435 = vmatmul.mubr.f32.gmra.mxu0 %v1052
  %v7436 = vpop.f32.mrf.mxu0
  %v7437 = vadd.f32 0.0, %v7436
  %v7438 = vpop.f32.mrf.mxu0
  %7439 = vmatprep.mubr.f32.mxu0 0.0
  %7440 = vmatmul.mubr.f32.gmra.mxu0 %v1053
  %v7441 = vpop.f32.mrf.mxu0
  %v7442 = vadd.f32 0.0, %v7441
  %v7443 = vpop.f32.mrf.mxu0
  %7444 = vmatprep.mubr.f32.mxu0 0.0
  %7445 = vmatmul.mubr.f32.gmra.mxu0 %v1054
  %v7446 = vpop.f32.mrf.mxu0
  %v7447 = vadd.f32 0.0, %v7446
  %v7448 = vpop.f32.mrf.mxu0
  %7449 = vmatprep.mubr.f32.mxu0 0.0
  %7450 = vmatmul.mubr.f32.gmra.mxu0 %v1055
  %v7451 = vpop.f32.mrf.mxu0
  %v7452 = vadd.f32 0.0, %v7451
  %v7453 = vpop.f32.mrf.mxu0
  %7454 = vmatprep.mubr.f32.mxu0 0.0
  %7455 = vmatmul.mubr.f32.gmra.mxu0 %v1056
  %v7456 = vpop.f32.mrf.mxu0
  %v7457 = vadd.f32 0.0, %v7456
  %v7458 = vpop.f32.mrf.mxu0
  %7459 = vmatprep.mubr.f32.mxu0 0.0
  %7460 = vmatmul.mubr.f32.gmra.mxu0 %v1057
  %v7461 = vpop.f32.mrf.mxu0
  %v7462 = vadd.f32 0.0, %v7461
  %v7463 = vpop.f32.mrf.mxu0
  %7464 = vmatprep.mubr.f32.mxu0 0.0
  %7465 = vmatmul.mubr.f32.gmra.mxu0 %v1058
  %v7466 = vpop.f32.mrf.mxu0
  %v7467 = vadd.f32 0.0, %v7466
  %v7468 = vpop.f32.mrf.mxu0
  %7469 = vmatprep.mubr.f32.mxu0 0.0
  %7470 = vmatmul.mubr.f32.gmra.mxu0 %v1059
  %v7471 = vpop.f32.mrf.mxu0
  %v7472 = vadd.f32 0.0, %v7471
  %v7473 = vpop.f32.mrf.mxu0
  %7474 = vmatprep.mubr.f32.mxu0 0.0
  %7475 = vmatmul.mubr.f32.gmra.mxu0 %v1060
  %v7476 = vpop.f32.mrf.mxu0
  %v7477 = vadd.f32 0.0, %v7476
  %v7478 = vpop.f32.mrf.mxu0
  %7479 = vmatprep.mubr.f32.mxu0 0.0
  %7480 = vmatmul.mubr.f32.gmra.mxu0 %v1061
  %v7481 = vpop.f32.mrf.mxu0
  %v7482 = vadd.f32 0.0, %v7481
  %v7483 = vpop.f32.mrf.mxu0
  %7484 = vmatprep.mubr.f32.mxu0 0.0
  %7485 = vmatmul.mubr.f32.gmra.mxu0 %v1062
  %v7486 = vpop.f32.mrf.mxu0
  %v7487 = vadd.f32 0.0, %v7486
  %v7488 = vpop.f32.mrf.mxu0
  %7489 = vmatprep.mubr.f32.mxu0 0.0
  %7490 = vmatmul.mubr.f32.gmra.mxu0 %v1063
  %v7491 = vpop.f32.mrf.mxu0
  %v7492 = vadd.f32 0.0, %v7491
  %v7493 = vpop.f32.mrf.mxu0
  %7494 = vmatprep.mubr.f32.mxu0 0.0
  %7495 = vmatmul.mubr.f32.gmra.mxu0 %v1064
  %v7496 = vpop.f32.mrf.mxu0
  %v7497 = vadd.f32 0.0, %v7496
  %v7498 = vpop.f32.mrf.mxu0
  %7499 = vmatprep.mubr.f32.mxu0 0.0
  %7500 = vmatmul.mubr.f32.gmra.mxu0 %v1065
  %v7501 = vpop.f32.mrf.mxu0
  %v7502 = vadd.f32 0.0, %v7501
  %v7503 = vpop.f32.mrf.mxu0
  %7504 = vmatprep.mubr.f32.mxu0 0.0
  %7505 = vmatmul.mubr.f32.gmra.mxu0 %v1066
  %v7506 = vpop.f32.mrf.mxu0
  %v7507 = vadd.f32 0.0, %v7506
  %v7508 = vpop.f32.mrf.mxu0
  %7509 = vdwg.mxu0
  %s7510 = scalar_lea.vmem %s8, 32
  %v7511 = vld [vmem:[%s7510] sm:$0xff]
  %v7512 = vld [vmem:[%s7510 + $0x8] sm:$0xff]
  %v7514 = vsel %vm6792, %v7432, 0
  %v7517 = vsel %vm6792, %v7437, 0
  %v7520 = vsel %vm6792, %v7442, 0
  %v7523 = vsel %vm6792, %v7447, 0
  %v7526 = vsel %vm6792, %v7452, 0
  %v7529 = vsel %vm6792, %v7457, 0
  %v7532 = vsel %vm6792, %v7462, 0
  %v7535 = vsel %vm6792, %v7467, 0
  %v7538 = vsel %vm6792, %v7472, 0
  %v7541 = vsel %vm6792, %v7477, 0
  %v7544 = vsel %vm6792, %v7482, 0
  %v7547 = vsel %vm6792, %v7487, 0
  %v7550 = vsel %vm6792, %v7492, 0
  %v7553 = vsel %vm6792, %v7497, 0
  %v7556 = vsel %vm6792, %v7502, 0
  %v7559 = vsel %vm6792, %v7507, 0
  %7561 = vmatprep.subr.mxu0 0.0
  %7562 = vmatpush1.msra.mxu0 0.0
  %7563 = vmatprep.subr.mxu0 0.0
  %7564 = vmatpush1.msra.mxu0 0.0
  %7565 = vmatprep.subr.mxu0 0.0
  %7566 = vmatpush1.msra.mxu0 0.0
  %7567 = vmatprep.subr.mxu0 0.0
  %7568 = vmatpush1.msra.mxu0 0.0
  %7569 = vmatprep.subr.mxu0 0.0
  %7570 = vmatpush1.msra.mxu0 0.0
  %7571 = vmatprep.subr.mxu0 0.0
  %7572 = vmatpush1.msra.mxu0 0.0
  %7573 = vmatprep.subr.mxu0 0.0
  %7574 = vmatpush1.msra.mxu0 0.0
  %7575 = vmatprep.subr.mxu0 0.0
  %7576 = vmatpush1.msra.mxu0 0.0
  %7577 = vmatprep.subr.mxu0 0.0
  %7578 = vmatpush1.msra.mxu0 0.0
  %7579 = vmatprep.subr.mxu0 0.0
  %7580 = vmatpush1.msra.mxu0 0.0
  %7581 = vmatprep.subr.mxu0 0.0
  %7582 = vmatpush1.msra.mxu0 0.0
  %7583 = vmatprep.subr.mxu0 0.0
  %7584 = vmatpush1.msra.mxu0 0.0
  %7585 = vmatprep.subr.mxu0 0.0
  %7586 = vmatpush1.msra.mxu0 0.0
  %7587 = vmatprep.subr.mxu0 0.0
  %7588 = vmatpush1.msra.mxu0 0.0
  %7589 = vmatprep.subr.mxu0 0.0
  %7590 = vmatpush1.msra.mxu0 %v7512
  %7591 = vmatprep.subr.mxu0 0.0
  %7592 = vmatpush1.msra.mxu0 %v7511
  %7593 = vmatprep.subr.mxu0 0.0
  %7594 = vmatpush2.msra.mxu0 0.0
  %7595 = vmatprep.subr.mxu0 0.0
  %7596 = vmatpush2.msra.mxu0 0.0
  %7597 = vmatprep.subr.mxu0 0.0
  %7598 = vmatpush2.msra.mxu0 0.0
  %7599 = vmatprep.subr.mxu0 0.0
  %7600 = vmatpush2.msra.mxu0 0.0
  %7601 = vmatprep.subr.mxu0 0.0
  %7602 = vmatpush2.msra.mxu0 0.0
  %7603 = vmatprep.subr.mxu0 0.0
  %7604 = vmatpush2.msra.mxu0 0.0
  %7605 = vmatprep.subr.mxu0 0.0
  %7606 = vmatpush2.msra.mxu0 0.0
  %7607 = vmatprep.subr.mxu0 0.0
  %7608 = vmatpush2.msra.mxu0 0.0
  %7609 = vmatprep.subr.mxu0 0.0
  %7610 = vmatpush2.msra.mxu0 0.0
  %7611 = vmatprep.subr.mxu0 0.0
  %7612 = vmatpush2.msra.mxu0 0.0
  %7613 = vmatprep.subr.mxu0 0.0
  %7614 = vmatpush2.msra.mxu0 0.0
  %7615 = vmatprep.subr.mxu0 0.0
  %7616 = vmatpush2.msra.mxu0 0.0
  %7617 = vmatprep.subr.mxu0 0.0
  %7618 = vmatpush2.msra.mxu0 0.0
  %7619 = vmatprep.subr.mxu0 0.0
  %7620 = vmatpush2.msra.mxu0 0.0
  %7621 = vmatprep.subr.mxu0 0.0
  %7622 = vmatpush2.msra.mxu0 0.0
  %7623 = vmatprep.subr.mxu0 0.0
  %7624 = vmatpush2.msra.mxu0 0.0
  %7625 = vmatprep.mubr.f32.mxu0 0.0
  %7626 = vmatmul.mubr.f32.gmra.mxu0 %v7514
  %v7627 = vpop.f32.mrf.mxu0
  %v7628 = vadd.f32 0.0, %v7627
  %v7629 = vpop.f32.mrf.mxu0
  %7630 = vmatprep.mubr.f32.mxu0 0.0
  %7631 = vmatmul.mubr.f32.gmra.mxu0 %v7517
  %v7632 = vpop.f32.mrf.mxu0
  %v7633 = vadd.f32 0.0, %v7632
  %v7634 = vpop.f32.mrf.mxu0
  %7635 = vmatprep.mubr.f32.mxu0 0.0
  %7636 = vmatmul.mubr.f32.gmra.mxu0 %v7520
  %v7637 = vpop.f32.mrf.mxu0
  %v7638 = vadd.f32 0.0, %v7637
  %v7639 = vpop.f32.mrf.mxu0
  %7640 = vmatprep.mubr.f32.mxu0 0.0
  %7641 = vmatmul.mubr.f32.gmra.mxu0 %v7523
  %v7642 = vpop.f32.mrf.mxu0
  %v7643 = vadd.f32 0.0, %v7642
  %v7644 = vpop.f32.mrf.mxu0
  %7645 = vmatprep.mubr.f32.mxu0 0.0
  %7646 = vmatmul.mubr.f32.gmra.mxu0 %v7526
  %v7647 = vpop.f32.mrf.mxu0
  %v7648 = vadd.f32 0.0, %v7647
  %v7649 = vpop.f32.mrf.mxu0
  %7650 = vmatprep.mubr.f32.mxu0 0.0
  %7651 = vmatmul.mubr.f32.gmra.mxu0 %v7529
  %v7652 = vpop.f32.mrf.mxu0
  %v7653 = vadd.f32 0.0, %v7652
  %v7654 = vpop.f32.mrf.mxu0
  %7655 = vmatprep.mubr.f32.mxu0 0.0
  %7656 = vmatmul.mubr.f32.gmra.mxu0 %v7532
  %v7657 = vpop.f32.mrf.mxu0
  %v7658 = vadd.f32 0.0, %v7657
  %v7659 = vpop.f32.mrf.mxu0
  %7660 = vmatprep.mubr.f32.mxu0 0.0
  %7661 = vmatmul.mubr.f32.gmra.mxu0 %v7535
  %v7662 = vpop.f32.mrf.mxu0
  %v7663 = vadd.f32 0.0, %v7662
  %v7664 = vpop.f32.mrf.mxu0
  %7665 = vmatprep.mubr.f32.mxu0 0.0
  %7666 = vmatmul.mubr.f32.gmra.mxu0 %v7538
  %v7667 = vpop.f32.mrf.mxu0
  %v7668 = vadd.f32 0.0, %v7667
  %v7669 = vpop.f32.mrf.mxu0
  %7670 = vmatprep.mubr.f32.mxu0 0.0
  %7671 = vmatmul.mubr.f32.gmra.mxu0 %v7541
  %v7672 = vpop.f32.mrf.mxu0
  %v7673 = vadd.f32 0.0, %v7672
  %v7674 = vpop.f32.mrf.mxu0
  %7675 = vmatprep.mubr.f32.mxu0 0.0
  %7676 = vmatmul.mubr.f32.gmra.mxu0 %v7544
  %v7677 = vpop.f32.mrf.mxu0
  %v7678 = vadd.f32 0.0, %v7677
  %v7679 = vpop.f32.mrf.mxu0
  %7680 = vmatprep.mubr.f32.mxu0 0.0
  %7681 = vmatmul.mubr.f32.gmra.mxu0 %v7547
  %v7682 = vpop.f32.mrf.mxu0
  %v7683 = vadd.f32 0.0, %v7682
  %v7684 = vpop.f32.mrf.mxu0
  %7685 = vmatprep.mubr.f32.mxu0 0.0
  %7686 = vmatmul.mubr.f32.gmra.mxu0 %v7550
  %v7687 = vpop.f32.mrf.mxu0
  %v7688 = vadd.f32 0.0, %v7687
  %v7689 = vpop.f32.mrf.mxu0
  %7690 = vmatprep.mubr.f32.mxu0 0.0
  %7691 = vmatmul.mubr.f32.gmra.mxu0 %v7553
  %v7692 = vpop.f32.mrf.mxu0
  %v7693 = vadd.f32 0.0, %v7692
  %v7694 = vpop.f32.mrf.mxu0
  %7695 = vmatprep.mubr.f32.mxu0 0.0
  %7696 = vmatmul.mubr.f32.gmra.mxu0 %v7556
  %v7697 = vpop.f32.mrf.mxu0
  %v7698 = vadd.f32 0.0, %v7697
  %v7699 = vpop.f32.mrf.mxu0
  %7700 = vmatprep.mubr.f32.mxu0 0.0
  %7701 = vmatmul.mubr.f32.gmra.mxu0 %v7559
  %v7702 = vpop.f32.mrf.mxu0
  %v7703 = vadd.f32 0.0, %v7702
  %v7704 = vpop.f32.mrf.mxu0
  %7705 = vdwg.mxu0
  %v7706 = vadd.f32 %v7349, %v7628
  %v7707 = vadd.f32 %v7350, %v7633
  %v7708 = vadd.f32 %v7351, %v7638
  %v7709 = vadd.f32 %v7352, %v7643
  %v7710 = vadd.f32 %v7353, %v7648
  %v7711 = vadd.f32 %v7354, %v7653
  %v7712 = vadd.f32 %v7355, %v7658
  %v7713 = vadd.f32 %v7356, %v7663
  %v7714 = vadd.f32 %v7357, %v7668
  %v7715 = vadd.f32 %v7358, %v7673
  %v7716 = vadd.f32 %v7359, %v7678
  %v7717 = vadd.f32 %v7360, %v7683
  %v7718 = vadd.f32 %v7361, %v7688
  %v7719 = vadd.f32 %v7362, %v7693
  %v7720 = vadd.f32 %v7363, %v7698
  %v7721 = vadd.f32 %v7364, %v7703
  %7722 = vmatprep.subr.mxu0 0.0
  %7723 = vmatpush1.msra.mxu0 %v6643
  %7724 = vmatprep.subr.mxu0 0.0
  %7725 = vmatpush1.msra.mxu0 %v6642
  %7726 = vmatprep.subr.mxu0 0.0
  %7727 = vmatpush1.msra.mxu0 %v6641
  %7728 = vmatprep.subr.mxu0 0.0
  %7729 = vmatpush1.msra.mxu0 %v6640
  %7730 = vmatprep.subr.mxu0 0.0
  %7731 = vmatpush1.msra.mxu0 %v6639
  %7732 = vmatprep.subr.mxu0 0.0
  %7733 = vmatpush1.msra.mxu0 %v6638
  %7734 = vmatprep.subr.mxu0 0.0
  %7735 = vmatpush1.msra.mxu0 %v6637
  %7736 = vmatprep.subr.mxu0 0.0
  %7737 = vmatpush1.msra.mxu0 %v6636
  %7738 = vmatprep.subr.mxu0 0.0
  %7739 = vmatpush1.msra.mxu0 %v6635
  %7740 = vmatprep.subr.mxu0 0.0
  %7741 = vmatpush1.msra.mxu0 %v6634
  %7742 = vmatprep.subr.mxu0 0.0
  %7743 = vmatpush1.msra.mxu0 %v6633
  %7744 = vmatprep.subr.mxu0 0.0
  %7745 = vmatpush1.msra.mxu0 %v6632
  %7746 = vmatprep.subr.mxu0 0.0
  %7747 = vmatpush1.msra.mxu0 %v6631
  %7748 = vmatprep.subr.mxu0 0.0
  %7749 = vmatpush1.msra.mxu0 %v6630
  %7750 = vmatprep.subr.mxu0 0.0
  %7751 = vmatpush1.msra.mxu0 %v6629
  %7752 = vmatprep.subr.mxu0 0.0
  %7753 = vmatpush1.msra.mxu0 %v6628
  %7754 = vmatprep.subr.mxu0 0.0
  %7755 = vmatpush2.msra.mxu0 0.0
  %7756 = vmatprep.subr.mxu0 0.0
  %7757 = vmatpush2.msra.mxu0 0.0
  %7758 = vmatprep.subr.mxu0 0.0
  %7759 = vmatpush2.msra.mxu0 0.0
  %7760 = vmatprep.subr.mxu0 0.0
  %7761 = vmatpush2.msra.mxu0 0.0
  %7762 = vmatprep.subr.mxu0 0.0
  %7763 = vmatpush2.msra.mxu0 0.0
  %7764 = vmatprep.subr.mxu0 0.0
  %7765 = vmatpush2.msra.mxu0 0.0
  %7766 = vmatprep.subr.mxu0 0.0
  %7767 = vmatpush2.msra.mxu0 0.0
  %7768 = vmatprep.subr.mxu0 0.0
  %7769 = vmatpush2.msra.mxu0 0.0
  %7770 = vmatprep.subr.mxu0 0.0
  %7771 = vmatpush2.msra.mxu0 0.0
  %7772 = vmatprep.subr.mxu0 0.0
  %7773 = vmatpush2.msra.mxu0 0.0
  %7774 = vmatprep.subr.mxu0 0.0
  %7775 = vmatpush2.msra.mxu0 0.0
  %7776 = vmatprep.subr.mxu0 0.0
  %7777 = vmatpush2.msra.mxu0 0.0
  %7778 = vmatprep.subr.mxu0 0.0
  %7779 = vmatpush2.msra.mxu0 0.0
  %7780 = vmatprep.subr.mxu0 0.0
  %7781 = vmatpush2.msra.mxu0 0.0
  %7782 = vmatprep.subr.mxu0 0.0
  %7783 = vmatpush2.msra.mxu0 0.0
  %7784 = vmatprep.subr.mxu0 0.0
  %7785 = vmatpush2.msra.mxu0 0.0
  %7786 = vmatprep.mubr.f32.mxu0 0.0
  %7787 = vmatmul.mubr.f32.gmra.mxu0 %v1427
  %v7788 = vpop.f32.mrf.mxu0
  %v7789 = vadd.f32 0.0, %v7788
  %v7790 = vpop.f32.mrf.mxu0
  %7791 = vmatprep.mubr.f32.mxu0 0.0
  %7792 = vmatmul.mubr.f32.gmra.mxu0 %v1428
  %v7793 = vpop.f32.mrf.mxu0
  %v7794 = vadd.f32 0.0, %v7793
  %v7795 = vpop.f32.mrf.mxu0
  %7796 = vmatprep.mubr.f32.mxu0 0.0
  %7797 = vmatmul.mubr.f32.gmra.mxu0 %v1429
  %v7798 = vpop.f32.mrf.mxu0
  %v7799 = vadd.f32 0.0, %v7798
  %v7800 = vpop.f32.mrf.mxu0
  %7801 = vmatprep.mubr.f32.mxu0 0.0
  %7802 = vmatmul.mubr.f32.gmra.mxu0 %v1430
  %v7803 = vpop.f32.mrf.mxu0
  %v7804 = vadd.f32 0.0, %v7803
  %v7805 = vpop.f32.mrf.mxu0
  %7806 = vmatprep.mubr.f32.mxu0 0.0
  %7807 = vmatmul.mubr.f32.gmra.mxu0 %v1431
  %v7808 = vpop.f32.mrf.mxu0
  %v7809 = vadd.f32 0.0, %v7808
  %v7810 = vpop.f32.mrf.mxu0
  %7811 = vmatprep.mubr.f32.mxu0 0.0
  %7812 = vmatmul.mubr.f32.gmra.mxu0 %v1432
  %v7813 = vpop.f32.mrf.mxu0
  %v7814 = vadd.f32 0.0, %v7813
  %v7815 = vpop.f32.mrf.mxu0
  %7816 = vmatprep.mubr.f32.mxu0 0.0
  %7817 = vmatmul.mubr.f32.gmra.mxu0 %v1433
  %v7818 = vpop.f32.mrf.mxu0
  %v7819 = vadd.f32 0.0, %v7818
  %v7820 = vpop.f32.mrf.mxu0
  %7821 = vmatprep.mubr.f32.mxu0 0.0
  %7822 = vmatmul.mubr.f32.gmra.mxu0 %v1434
  %v7823 = vpop.f32.mrf.mxu0
  %v7824 = vadd.f32 0.0, %v7823
  %v7825 = vpop.f32.mrf.mxu0
  %7826 = vmatprep.mubr.f32.mxu0 0.0
  %7827 = vmatmul.mubr.f32.gmra.mxu0 %v1435
  %v7828 = vpop.f32.mrf.mxu0
  %v7829 = vadd.f32 0.0, %v7828
  %v7830 = vpop.f32.mrf.mxu0
  %7831 = vmatprep.mubr.f32.mxu0 0.0
  %7832 = vmatmul.mubr.f32.gmra.mxu0 %v1436
  %v7833 = vpop.f32.mrf.mxu0
  %v7834 = vadd.f32 0.0, %v7833
  %v7835 = vpop.f32.mrf.mxu0
  %7836 = vmatprep.mubr.f32.mxu0 0.0
  %7837 = vmatmul.mubr.f32.gmra.mxu0 %v1437
  %v7838 = vpop.f32.mrf.mxu0
  %v7839 = vadd.f32 0.0, %v7838
  %v7840 = vpop.f32.mrf.mxu0
  %7841 = vmatprep.mubr.f32.mxu0 0.0
  %7842 = vmatmul.mubr.f32.gmra.mxu0 %v1438
  %v7843 = vpop.f32.mrf.mxu0
  %v7844 = vadd.f32 0.0, %v7843
  %v7845 = vpop.f32.mrf.mxu0
  %7846 = vmatprep.mubr.f32.mxu0 0.0
  %7847 = vmatmul.mubr.f32.gmra.mxu0 %v1439
  %v7848 = vpop.f32.mrf.mxu0
  %v7849 = vadd.f32 0.0, %v7848
  %v7850 = vpop.f32.mrf.mxu0
  %7851 = vmatprep.mubr.f32.mxu0 0.0
  %7852 = vmatmul.mubr.f32.gmra.mxu0 %v1440
  %v7853 = vpop.f32.mrf.mxu0
  %v7854 = vadd.f32 0.0, %v7853
  %v7855 = vpop.f32.mrf.mxu0
  %7856 = vmatprep.mubr.f32.mxu0 0.0
  %7857 = vmatmul.mubr.f32.gmra.mxu0 %v1441
  %v7858 = vpop.f32.mrf.mxu0
  %v7859 = vadd.f32 0.0, %v7858
  %v7860 = vpop.f32.mrf.mxu0
  %7861 = vmatprep.mubr.f32.mxu0 0.0
  %7862 = vmatmul.mubr.f32.gmra.mxu0 %v1442
  %v7863 = vpop.f32.mrf.mxu0
  %v7864 = vadd.f32 0.0, %v7863
  %v7865 = vpop.f32.mrf.mxu0
  %7866 = vdwg.mxu0
  %s7867 = scalar_lea.vmem %s8, 48
  %v7868 = vld [vmem:[%s7867] sm:$0xff]
  %v7869 = vld [vmem:[%s7867 + $0x8] sm:$0xff]
  %v7871 = vsel %vm6792, %v7789, 0
  %v7874 = vsel %vm6792, %v7794, 0
  %v7877 = vsel %vm6792, %v7799, 0
  %v7880 = vsel %vm6792, %v7804, 0
  %v7883 = vsel %vm6792, %v7809, 0
  %v7886 = vsel %vm6792, %v7814, 0
  %v7889 = vsel %vm6792, %v7819, 0
  %v7892 = vsel %vm6792, %v7824, 0
  %v7895 = vsel %vm6792, %v7829, 0
  %v7898 = vsel %vm6792, %v7834, 0
  %v7901 = vsel %vm6792, %v7839, 0
  %v7904 = vsel %vm6792, %v7844, 0
  %v7907 = vsel %vm6792, %v7849, 0
  %v7910 = vsel %vm6792, %v7854, 0
  %v7913 = vsel %vm6792, %v7859, 0
  %v7916 = vsel %vm6792, %v7864, 0
  %7918 = vmatprep.subr.mxu0 0.0
  %7919 = vmatpush1.msra.mxu0 0.0
  %7920 = vmatprep.subr.mxu0 0.0
  %7921 = vmatpush1.msra.mxu0 0.0
  %7922 = vmatprep.subr.mxu0 0.0
  %7923 = vmatpush1.msra.mxu0 0.0
  %7924 = vmatprep.subr.mxu0 0.0
  %7925 = vmatpush1.msra.mxu0 0.0
  %7926 = vmatprep.subr.mxu0 0.0
  %7927 = vmatpush1.msra.mxu0 0.0
  %7928 = vmatprep.subr.mxu0 0.0
  %7929 = vmatpush1.msra.mxu0 0.0
  %7930 = vmatprep.subr.mxu0 0.0
  %7931 = vmatpush1.msra.mxu0 0.0
  %7932 = vmatprep.subr.mxu0 0.0
  %7933 = vmatpush1.msra.mxu0 0.0
  %7934 = vmatprep.subr.mxu0 0.0
  %7935 = vmatpush1.msra.mxu0 0.0
  %7936 = vmatprep.subr.mxu0 0.0
  %7937 = vmatpush1.msra.mxu0 0.0
  %7938 = vmatprep.subr.mxu0 0.0
  %7939 = vmatpush1.msra.mxu0 0.0
  %7940 = vmatprep.subr.mxu0 0.0
  %7941 = vmatpush1.msra.mxu0 0.0
  %7942 = vmatprep.subr.mxu0 0.0
  %7943 = vmatpush1.msra.mxu0 0.0
  %7944 = vmatprep.subr.mxu0 0.0
  %7945 = vmatpush1.msra.mxu0 0.0
  %7946 = vmatprep.subr.mxu0 0.0
  %7947 = vmatpush1.msra.mxu0 %v7869
  %7948 = vmatprep.subr.mxu0 0.0
  %7949 = vmatpush1.msra.mxu0 %v7868
  %7950 = vmatprep.subr.mxu0 0.0
  %7951 = vmatpush2.msra.mxu0 0.0
  %7952 = vmatprep.subr.mxu0 0.0
  %7953 = vmatpush2.msra.mxu0 0.0
  %7954 = vmatprep.subr.mxu0 0.0
  %7955 = vmatpush2.msra.mxu0 0.0
  %7956 = vmatprep.subr.mxu0 0.0
  %7957 = vmatpush2.msra.mxu0 0.0
  %7958 = vmatprep.subr.mxu0 0.0
  %7959 = vmatpush2.msra.mxu0 0.0
  %7960 = vmatprep.subr.mxu0 0.0
  %7961 = vmatpush2.msra.mxu0 0.0
  %7962 = vmatprep.subr.mxu0 0.0
  %7963 = vmatpush2.msra.mxu0 0.0
  %7964 = vmatprep.subr.mxu0 0.0
  %7965 = vmatpush2.msra.mxu0 0.0
  %7966 = vmatprep.subr.mxu0 0.0
  %7967 = vmatpush2.msra.mxu0 0.0
  %7968 = vmatprep.subr.mxu0 0.0
  %7969 = vmatpush2.msra.mxu0 0.0
  %7970 = vmatprep.subr.mxu0 0.0
  %7971 = vmatpush2.msra.mxu0 0.0
  %7972 = vmatprep.subr.mxu0 0.0
  %7973 = vmatpush2.msra.mxu0 0.0
  %7974 = vmatprep.subr.mxu0 0.0
  %7975 = vmatpush2.msra.mxu0 0.0
  %7976 = vmatprep.subr.mxu0 0.0
  %7977 = vmatpush2.msra.mxu0 0.0
  %7978 = vmatprep.subr.mxu0 0.0
  %7979 = vmatpush2.msra.mxu0 0.0
  %7980 = vmatprep.subr.mxu0 0.0
  %7981 = vmatpush2.msra.mxu0 0.0
  %7982 = vmatprep.mubr.f32.mxu0 0.0
  %7983 = vmatmul.mubr.f32.gmra.mxu0 %v7871
  %v7984 = vpop.f32.mrf.mxu0
  %v7985 = vadd.f32 0.0, %v7984
  %v7986 = vpop.f32.mrf.mxu0
  %7987 = vmatprep.mubr.f32.mxu0 0.0
  %7988 = vmatmul.mubr.f32.gmra.mxu0 %v7874
  %v7989 = vpop.f32.mrf.mxu0
  %v7990 = vadd.f32 0.0, %v7989
  %v7991 = vpop.f32.mrf.mxu0
  %7992 = vmatprep.mubr.f32.mxu0 0.0
  %7993 = vmatmul.mubr.f32.gmra.mxu0 %v7877
  %v7994 = vpop.f32.mrf.mxu0
  %v7995 = vadd.f32 0.0, %v7994
  %v7996 = vpop.f32.mrf.mxu0
  %7997 = vmatprep.mubr.f32.mxu0 0.0
  %7998 = vmatmul.mubr.f32.gmra.mxu0 %v7880
  %v7999 = vpop.f32.mrf.mxu0
  %v8000 = vadd.f32 0.0, %v7999
  %v8001 = vpop.f32.mrf.mxu0
  %8002 = vmatprep.mubr.f32.mxu0 0.0
  %8003 = vmatmul.mubr.f32.gmra.mxu0 %v7883
  %v8004 = vpop.f32.mrf.mxu0
  %v8005 = vadd.f32 0.0, %v8004
  %v8006 = vpop.f32.mrf.mxu0
  %8007 = vmatprep.mubr.f32.mxu0 0.0
  %8008 = vmatmul.mubr.f32.gmra.mxu0 %v7886
  %v8009 = vpop.f32.mrf.mxu0
  %v8010 = vadd.f32 0.0, %v8009
  %v8011 = vpop.f32.mrf.mxu0
  %8012 = vmatprep.mubr.f32.mxu0 0.0
  %8013 = vmatmul.mubr.f32.gmra.mxu0 %v7889
  %v8014 = vpop.f32.mrf.mxu0
  %v8015 = vadd.f32 0.0, %v8014
  %v8016 = vpop.f32.mrf.mxu0
  %8017 = vmatprep.mubr.f32.mxu0 0.0
  %8018 = vmatmul.mubr.f32.gmra.mxu0 %v7892
  %v8019 = vpop.f32.mrf.mxu0
  %v8020 = vadd.f32 0.0, %v8019
  %v8021 = vpop.f32.mrf.mxu0
  %8022 = vmatprep.mubr.f32.mxu0 0.0
  %8023 = vmatmul.mubr.f32.gmra.mxu0 %v7895
  %v8024 = vpop.f32.mrf.mxu0
  %v8025 = vadd.f32 0.0, %v8024
  %v8026 = vpop.f32.mrf.mxu0
  %8027 = vmatprep.mubr.f32.mxu0 0.0
  %8028 = vmatmul.mubr.f32.gmra.mxu0 %v7898
  %v8029 = vpop.f32.mrf.mxu0
  %v8030 = vadd.f32 0.0, %v8029
  %v8031 = vpop.f32.mrf.mxu0
  %8032 = vmatprep.mubr.f32.mxu0 0.0
  %8033 = vmatmul.mubr.f32.gmra.mxu0 %v7901
  %v8034 = vpop.f32.mrf.mxu0
  %v8035 = vadd.f32 0.0, %v8034
  %v8036 = vpop.f32.mrf.mxu0
  %8037 = vmatprep.mubr.f32.mxu0 0.0
  %8038 = vmatmul.mubr.f32.gmra.mxu0 %v7904
  %v8039 = vpop.f32.mrf.mxu0
  %v8040 = vadd.f32 0.0, %v8039
  %v8041 = vpop.f32.mrf.mxu0
  %8042 = vmatprep.mubr.f32.mxu0 0.0
  %8043 = vmatmul.mubr.f32.gmra.mxu0 %v7907
  %v8044 = vpop.f32.mrf.mxu0
  %v8045 = vadd.f32 0.0, %v8044
  %v8046 = vpop.f32.mrf.mxu0
  %8047 = vmatprep.mubr.f32.mxu0 0.0
  %8048 = vmatmul.mubr.f32.gmra.mxu0 %v7910
  %v8049 = vpop.f32.mrf.mxu0
  %v8050 = vadd.f32 0.0, %v8049
  %v8051 = vpop.f32.mrf.mxu0
  %8052 = vmatprep.mubr.f32.mxu0 0.0
  %8053 = vmatmul.mubr.f32.gmra.mxu0 %v7913
  %v8054 = vpop.f32.mrf.mxu0
  %v8055 = vadd.f32 0.0, %v8054
  %v8056 = vpop.f32.mrf.mxu0
  %8057 = vmatprep.mubr.f32.mxu0 0.0
  %8058 = vmatmul.mubr.f32.gmra.mxu0 %v7916
  %v8059 = vpop.f32.mrf.mxu0
  %v8060 = vadd.f32 0.0, %v8059
  %v8061 = vpop.f32.mrf.mxu0
  %8062 = vdwg.mxu0
  %v8063 = vadd.f32 %v7706, %v7985
  %v8064 = vadd.f32 %v7707, %v7990
  %v8065 = vadd.f32 %v7708, %v7995
  %v8066 = vadd.f32 %v7709, %v8000
  %v8067 = vadd.f32 %v7710, %v8005
  %v8068 = vadd.f32 %v7711, %v8010
  %v8069 = vadd.f32 %v7712, %v8015
  %v8070 = vadd.f32 %v7713, %v8020
  %v8071 = vadd.f32 %v7714, %v8025
  %v8072 = vadd.f32 %v7715, %v8030
  %v8073 = vadd.f32 %v7716, %v8035
  %v8074 = vadd.f32 %v7717, %v8040
  %v8075 = vadd.f32 %v7718, %v8045
  %v8076 = vadd.f32 %v7719, %v8050
  %v8077 = vadd.f32 %v7720, %v8055
  %v8078 = vadd.f32 %v7721, %v8060
  %s8079 = scalar_lea.vmem %s8, 64
  %v8080 = vld [vmem:[%s8079] sm:$0xff]
  %v8081 = vld [vmem:[%s8079 + $0x8] sm:$0xff]
  %v8083 = vsel %vm6792, %v6628, 0
  %v8086 = vsel %vm6792, %v6629, 0
  %v8089 = vsel %vm6792, %v6630, 0
  %v8092 = vsel %vm6792, %v6631, 0
  %v8095 = vsel %vm6792, %v6632, 0
  %v8098 = vsel %vm6792, %v6633, 0
  %v8101 = vsel %vm6792, %v6634, 0
  %v8104 = vsel %vm6792, %v6635, 0
  %v8107 = vsel %vm6792, %v6636, 0
  %v8110 = vsel %vm6792, %v6637, 0
  %v8113 = vsel %vm6792, %v6638, 0
  %v8116 = vsel %vm6792, %v6639, 0
  %v8119 = vsel %vm6792, %v6640, 0
  %v8122 = vsel %vm6792, %v6641, 0
  %v8125 = vsel %vm6792, %v6642, 0
  %v8128 = vsel %vm6792, %v6643, 0
  %8130 = vmatprep.subr.mxu0 0.0
  %8131 = vmatpush1.msra.mxu0 0.0
  %8132 = vmatprep.subr.mxu0 0.0
  %8133 = vmatpush1.msra.mxu0 0.0
  %8134 = vmatprep.subr.mxu0 0.0
  %8135 = vmatpush1.msra.mxu0 0.0
  %8136 = vmatprep.subr.mxu0 0.0
  %8137 = vmatpush1.msra.mxu0 0.0
  %8138 = vmatprep.subr.mxu0 0.0
  %8139 = vmatpush1.msra.mxu0 0.0
  %8140 = vmatprep.subr.mxu0 0.0
  %8141 = vmatpush1.msra.mxu0 0.0
  %8142 = vmatprep.subr.mxu0 0.0
  %8143 = vmatpush1.msra.mxu0 0.0
  %8144 = vmatprep.subr.mxu0 0.0
  %8145 = vmatpush1.msra.mxu0 0.0
  %8146 = vmatprep.subr.mxu0 0.0
  %8147 = vmatpush1.msra.mxu0 0.0
  %8148 = vmatprep.subr.mxu0 0.0
  %8149 = vmatpush1.msra.mxu0 0.0
  %8150 = vmatprep.subr.mxu0 0.0
  %8151 = vmatpush1.msra.mxu0 0.0
  %8152 = vmatprep.subr.mxu0 0.0
  %8153 = vmatpush1.msra.mxu0 0.0
  %8154 = vmatprep.subr.mxu0 0.0
  %8155 = vmatpush1.msra.mxu0 0.0
  %8156 = vmatprep.subr.mxu0 0.0
  %8157 = vmatpush1.msra.mxu0 0.0
  %8158 = vmatprep.subr.mxu0 0.0
  %8159 = vmatpush1.msra.mxu0 %v8081
  %8160 = vmatprep.subr.mxu0 0.0
  %8161 = vmatpush1.msra.mxu0 %v8080
  %8162 = vmatprep.subr.mxu0 0.0
  %8163 = vmatpush2.msra.mxu0 0.0
  %8164 = vmatprep.subr.mxu0 0.0
  %8165 = vmatpush2.msra.mxu0 0.0
  %8166 = vmatprep.subr.mxu0 0.0
  %8167 = vmatpush2.msra.mxu0 0.0
  %8168 = vmatprep.subr.mxu0 0.0
  %8169 = vmatpush2.msra.mxu0 0.0
  %8170 = vmatprep.subr.mxu0 0.0
  %8171 = vmatpush2.msra.mxu0 0.0
  %8172 = vmatprep.subr.mxu0 0.0
  %8173 = vmatpush2.msra.mxu0 0.0
  %8174 = vmatprep.subr.mxu0 0.0
  %8175 = vmatpush2.msra.mxu0 0.0
  %8176 = vmatprep.subr.mxu0 0.0
  %8177 = vmatpush2.msra.mxu0 0.0
  %8178 = vmatprep.subr.mxu0 0.0
  %8179 = vmatpush2.msra.mxu0 0.0
  %8180 = vmatprep.subr.mxu0 0.0
  %8181 = vmatpush2.msra.mxu0 0.0
  %8182 = vmatprep.subr.mxu0 0.0
  %8183 = vmatpush2.msra.mxu0 0.0
  %8184 = vmatprep.subr.mxu0 0.0
  %8185 = vmatpush2.msra.mxu0 0.0
  %8186 = vmatprep.subr.mxu0 0.0
  %8187 = vmatpush2.msra.mxu0 0.0
  %8188 = vmatprep.subr.mxu0 0.0
  %8189 = vmatpush2.msra.mxu0 0.0
  %8190 = vmatprep.subr.mxu0 0.0
  %8191 = vmatpush2.msra.mxu0 0.0
  %8192 = vmatprep.subr.mxu0 0.0
  %8193 = vmatpush2.msra.mxu0 0.0
  %8194 = vmatprep.mubr.f32.mxu0 0.0
  %8195 = vmatmul.mubr.f32.gmra.mxu0 %v8083
  %v8196 = vpop.f32.mrf.mxu0
  %v8197 = vadd.f32 0.0, %v8196
  %v8198 = vpop.f32.mrf.mxu0
  %8199 = vmatprep.mubr.f32.mxu0 0.0
  %8200 = vmatmul.mubr.f32.gmra.mxu0 %v8086
  %v8201 = vpop.f32.mrf.mxu0
  %v8202 = vadd.f32 0.0, %v8201
  %v8203 = vpop.f32.mrf.mxu0
  %8204 = vmatprep.mubr.f32.mxu0 0.0
  %8205 = vmatmul.mubr.f32.gmra.mxu0 %v8089
  %v8206 = vpop.f32.mrf.mxu0
  %v8207 = vadd.f32 0.0, %v8206
  %v8208 = vpop.f32.mrf.mxu0
  %8209 = vmatprep.mubr.f32.mxu0 0.0
  %8210 = vmatmul.mubr.f32.gmra.mxu0 %v8092
  %v8211 = vpop.f32.mrf.mxu0
  %v8212 = vadd.f32 0.0, %v8211
  %v8213 = vpop.f32.mrf.mxu0
  %8214 = vmatprep.mubr.f32.mxu0 0.0
  %8215 = vmatmul.mubr.f32.gmra.mxu0 %v8095
  %v8216 = vpop.f32.mrf.mxu0
  %v8217 = vadd.f32 0.0, %v8216
  %v8218 = vpop.f32.mrf.mxu0
  %8219 = vmatprep.mubr.f32.mxu0 0.0
  %8220 = vmatmul.mubr.f32.gmra.mxu0 %v8098
  %v8221 = vpop.f32.mrf.mxu0
  %v8222 = vadd.f32 0.0, %v8221
  %v8223 = vpop.f32.mrf.mxu0
  %8224 = vmatprep.mubr.f32.mxu0 0.0
  %8225 = vmatmul.mubr.f32.gmra.mxu0 %v8101
  %v8226 = vpop.f32.mrf.mxu0
  %v8227 = vadd.f32 0.0, %v8226
  %v8228 = vpop.f32.mrf.mxu0
  %8229 = vmatprep.mubr.f32.mxu0 0.0
  %8230 = vmatmul.mubr.f32.gmra.mxu0 %v8104
  %v8231 = vpop.f32.mrf.mxu0
  %v8232 = vadd.f32 0.0, %v8231
  %v8233 = vpop.f32.mrf.mxu0
  %8234 = vmatprep.mubr.f32.mxu0 0.0
  %8235 = vmatmul.mubr.f32.gmra.mxu0 %v8107
  %v8236 = vpop.f32.mrf.mxu0
  %v8237 = vadd.f32 0.0, %v8236
  %v8238 = vpop.f32.mrf.mxu0
  %8239 = vmatprep.mubr.f32.mxu0 0.0
  %8240 = vmatmul.mubr.f32.gmra.mxu0 %v8110
  %v8241 = vpop.f32.mrf.mxu0
  %v8242 = vadd.f32 0.0, %v8241
  %v8243 = vpop.f32.mrf.mxu0
  %8244 = vmatprep.mubr.f32.mxu0 0.0
  %8245 = vmatmul.mubr.f32.gmra.mxu0 %v8113
  %v8246 = vpop.f32.mrf.mxu0
  %v8247 = vadd.f32 0.0, %v8246
  %v8248 = vpop.f32.mrf.mxu0
  %8249 = vmatprep.mubr.f32.mxu0 0.0
  %8250 = vmatmul.mubr.f32.gmra.mxu0 %v8116
  %v8251 = vpop.f32.mrf.mxu0
  %v8252 = vadd.f32 0.0, %v8251
  %v8253 = vpop.f32.mrf.mxu0
  %8254 = vmatprep.mubr.f32.mxu0 0.0
  %8255 = vmatmul.mubr.f32.gmra.mxu0 %v8119
  %v8256 = vpop.f32.mrf.mxu0
  %v8257 = vadd.f32 0.0, %v8256
  %v8258 = vpop.f32.mrf.mxu0
  %8259 = vmatprep.mubr.f32.mxu0 0.0
  %8260 = vmatmul.mubr.f32.gmra.mxu0 %v8122
  %v8261 = vpop.f32.mrf.mxu0
  %v8262 = vadd.f32 0.0, %v8261
  %v8263 = vpop.f32.mrf.mxu0
  %8264 = vmatprep.mubr.f32.mxu0 0.0
  %8265 = vmatmul.mubr.f32.gmra.mxu0 %v8125
  %v8266 = vpop.f32.mrf.mxu0
  %v8267 = vadd.f32 0.0, %v8266
  %v8268 = vpop.f32.mrf.mxu0
  %8269 = vmatprep.mubr.f32.mxu0 0.0
  %8270 = vmatmul.mubr.f32.gmra.mxu0 %v8128
  %v8271 = vpop.f32.mrf.mxu0
  %v8272 = vadd.f32 0.0, %v8271
  %v8273 = vpop.f32.mrf.mxu0
  %8274 = vdwg.mxu0
  %v8275 = vadd.f32 %v8063, %v8197
  %v8276 = vadd.f32 %v8064, %v8202
  %v8277 = vadd.f32 %v8065, %v8207
  %v8278 = vadd.f32 %v8066, %v8212
  %v8279 = vadd.f32 %v8067, %v8217
  %v8280 = vadd.f32 %v8068, %v8222
  %v8281 = vadd.f32 %v8069, %v8227
  %v8282 = vadd.f32 %v8070, %v8232
  %v8283 = vadd.f32 %v8071, %v8237
  %v8284 = vadd.f32 %v8072, %v8242
  %v8285 = vadd.f32 %v8073, %v8247
  %v8286 = vadd.f32 %v8074, %v8252
  %v8287 = vadd.f32 %v8075, %v8257
  %v8288 = vadd.f32 %v8076, %v8262
  %v8289 = vadd.f32 %v8077, %v8267
  %v8290 = vadd.f32 %v8078, %v8272
  %8291 = vmatprep.subr.mxu0 0.0
  %8292 = vmatpush1.msra.mxu0 %v6643
  %8293 = vmatprep.subr.mxu0 0.0
  %8294 = vmatpush1.msra.mxu0 %v6642
  %8295 = vmatprep.subr.mxu0 0.0
  %8296 = vmatpush1.msra.mxu0 %v6641
  %8297 = vmatprep.subr.mxu0 0.0
  %8298 = vmatpush1.msra.mxu0 %v6640
  %8299 = vmatprep.subr.mxu0 0.0
  %8300 = vmatpush1.msra.mxu0 %v6639
  %8301 = vmatprep.subr.mxu0 0.0
  %8302 = vmatpush1.msra.mxu0 %v6638
  %8303 = vmatprep.subr.mxu0 0.0
  %8304 = vmatpush1.msra.mxu0 %v6637
  %8305 = vmatprep.subr.mxu0 0.0
  %8306 = vmatpush1.msra.mxu0 %v6636
  %8307 = vmatprep.subr.mxu0 0.0
  %8308 = vmatpush1.msra.mxu0 %v6635
  %8309 = vmatprep.subr.mxu0 0.0
  %8310 = vmatpush1.msra.mxu0 %v6634
  %8311 = vmatprep.subr.mxu0 0.0
  %8312 = vmatpush1.msra.mxu0 %v6633
  %8313 = vmatprep.subr.mxu0 0.0
  %8314 = vmatpush1.msra.mxu0 %v6632
  %8315 = vmatprep.subr.mxu0 0.0
  %8316 = vmatpush1.msra.mxu0 %v6631
  %8317 = vmatprep.subr.mxu0 0.0
  %8318 = vmatpush1.msra.mxu0 %v6630
  %8319 = vmatprep.subr.mxu0 0.0
  %8320 = vmatpush1.msra.mxu0 %v6629
  %8321 = vmatprep.subr.mxu0 0.0
  %8322 = vmatpush1.msra.mxu0 %v6628
  %8323 = vmatprep.subr.mxu0 0.0
  %8324 = vmatpush2.msra.mxu0 0.0
  %8325 = vmatprep.subr.mxu0 0.0
  %8326 = vmatpush2.msra.mxu0 0.0
  %8327 = vmatprep.subr.mxu0 0.0
  %8328 = vmatpush2.msra.mxu0 0.0
  %8329 = vmatprep.subr.mxu0 0.0
  %8330 = vmatpush2.msra.mxu0 0.0
  %8331 = vmatprep.subr.mxu0 0.0
  %8332 = vmatpush2.msra.mxu0 0.0
  %8333 = vmatprep.subr.mxu0 0.0
  %8334 = vmatpush2.msra.mxu0 0.0
  %8335 = vmatprep.subr.mxu0 0.0
  %8336 = vmatpush2.msra.mxu0 0.0
  %8337 = vmatprep.subr.mxu0 0.0
  %8338 = vmatpush2.msra.mxu0 0.0
  %8339 = vmatprep.subr.mxu0 0.0
  %8340 = vmatpush2.msra.mxu0 0.0
  %8341 = vmatprep.subr.mxu0 0.0
  %8342 = vmatpush2.msra.mxu0 0.0
  %8343 = vmatprep.subr.mxu0 0.0
  %8344 = vmatpush2.msra.mxu0 0.0
  %8345 = vmatprep.subr.mxu0 0.0
  %8346 = vmatpush2.msra.mxu0 0.0
  %8347 = vmatprep.subr.mxu0 0.0
  %8348 = vmatpush2.msra.mxu0 0.0
  %8349 = vmatprep.subr.mxu0 0.0
  %8350 = vmatpush2.msra.mxu0 0.0
  %8351 = vmatprep.subr.mxu0 0.0
  %8352 = vmatpush2.msra.mxu0 0.0
  %8353 = vmatprep.subr.mxu0 0.0
  %8354 = vmatpush2.msra.mxu0 0.0
  %8355 = vmatprep.mubr.f32.mxu0 0.0
  %8356 = vmatmul.mubr.f32.gmra.mxu0 %v2017
  %v8357 = vpop.f32.mrf.mxu0
  %v8358 = vadd.f32 0.0, %v8357
  %v8359 = vpop.f32.mrf.mxu0
  %8360 = vmatprep.mubr.f32.mxu0 0.0
  %8361 = vmatmul.mubr.f32.gmra.mxu0 %v2018
  %v8362 = vpop.f32.mrf.mxu0
  %v8363 = vadd.f32 0.0, %v8362
  %v8364 = vpop.f32.mrf.mxu0
  %8365 = vmatprep.mubr.f32.mxu0 0.0
  %8366 = vmatmul.mubr.f32.gmra.mxu0 %v2019
  %v8367 = vpop.f32.mrf.mxu0
  %v8368 = vadd.f32 0.0, %v8367
  %v8369 = vpop.f32.mrf.mxu0
  %8370 = vmatprep.mubr.f32.mxu0 0.0
  %8371 = vmatmul.mubr.f32.gmra.mxu0 %v2020
  %v8372 = vpop.f32.mrf.mxu0
  %v8373 = vadd.f32 0.0, %v8372
  %v8374 = vpop.f32.mrf.mxu0
  %8375 = vmatprep.mubr.f32.mxu0 0.0
  %8376 = vmatmul.mubr.f32.gmra.mxu0 %v2021
  %v8377 = vpop.f32.mrf.mxu0
  %v8378 = vadd.f32 0.0, %v8377
  %v8379 = vpop.f32.mrf.mxu0
  %8380 = vmatprep.mubr.f32.mxu0 0.0
  %8381 = vmatmul.mubr.f32.gmra.mxu0 %v2022
  %v8382 = vpop.f32.mrf.mxu0
  %v8383 = vadd.f32 0.0, %v8382
  %v8384 = vpop.f32.mrf.mxu0
  %8385 = vmatprep.mubr.f32.mxu0 0.0
  %8386 = vmatmul.mubr.f32.gmra.mxu0 %v2023
  %v8387 = vpop.f32.mrf.mxu0
  %v8388 = vadd.f32 0.0, %v8387
  %v8389 = vpop.f32.mrf.mxu0
  %8390 = vmatprep.mubr.f32.mxu0 0.0
  %8391 = vmatmul.mubr.f32.gmra.mxu0 %v2024
  %v8392 = vpop.f32.mrf.mxu0
  %v8393 = vadd.f32 0.0, %v8392
  %v8394 = vpop.f32.mrf.mxu0
  %8395 = vmatprep.mubr.f32.mxu0 0.0
  %8396 = vmatmul.mubr.f32.gmra.mxu0 %v2025
  %v8397 = vpop.f32.mrf.mxu0
  %v8398 = vadd.f32 0.0, %v8397
  %v8399 = vpop.f32.mrf.mxu0
  %8400 = vmatprep.mubr.f32.mxu0 0.0
  %8401 = vmatmul.mubr.f32.gmra.mxu0 %v2026
  %v8402 = vpop.f32.mrf.mxu0
  %v8403 = vadd.f32 0.0, %v8402
  %v8404 = vpop.f32.mrf.mxu0
  %8405 = vmatprep.mubr.f32.mxu0 0.0
  %8406 = vmatmul.mubr.f32.gmra.mxu0 %v2027
  %v8407 = vpop.f32.mrf.mxu0
  %v8408 = vadd.f32 0.0, %v8407
  %v8409 = vpop.f32.mrf.mxu0
  %8410 = vmatprep.mubr.f32.mxu0 0.0
  %8411 = vmatmul.mubr.f32.gmra.mxu0 %v2028
  %v8412 = vpop.f32.mrf.mxu0
  %v8413 = vadd.f32 0.0, %v8412
  %v8414 = vpop.f32.mrf.mxu0
  %8415 = vmatprep.mubr.f32.mxu0 0.0
  %8416 = vmatmul.mubr.f32.gmra.mxu0 %v2029
  %v8417 = vpop.f32.mrf.mxu0
  %v8418 = vadd.f32 0.0, %v8417
  %v8419 = vpop.f32.mrf.mxu0
  %8420 = vmatprep.mubr.f32.mxu0 0.0
  %8421 = vmatmul.mubr.f32.gmra.mxu0 %v2030
  %v8422 = vpop.f32.mrf.mxu0
  %v8423 = vadd.f32 0.0, %v8422
  %v8424 = vpop.f32.mrf.mxu0
  %8425 = vmatprep.mubr.f32.mxu0 0.0
  %8426 = vmatmul.mubr.f32.gmra.mxu0 %v2031
  %v8427 = vpop.f32.mrf.mxu0
  %v8428 = vadd.f32 0.0, %v8427
  %v8429 = vpop.f32.mrf.mxu0
  %8430 = vmatprep.mubr.f32.mxu0 0.0
  %8431 = vmatmul.mubr.f32.gmra.mxu0 %v2032
  %v8432 = vpop.f32.mrf.mxu0
  %v8433 = vadd.f32 0.0, %v8432
  %v8434 = vpop.f32.mrf.mxu0
  %8435 = vdwg.mxu0
  %s8436 = scalar_lea.vmem %s8, 80
  %v8437 = vld [vmem:[%s8436] sm:$0xff]
  %v8438 = vld [vmem:[%s8436 + $0x8] sm:$0xff]
  %v8440 = vsel %vm6792, %v8358, 0
  %v8443 = vsel %vm6792, %v8363, 0
  %v8446 = vsel %vm6792, %v8368, 0
  %v8449 = vsel %vm6792, %v8373, 0
  %v8452 = vsel %vm6792, %v8378, 0
  %v8455 = vsel %vm6792, %v8383, 0
  %v8458 = vsel %vm6792, %v8388, 0
  %v8461 = vsel %vm6792, %v8393, 0
  %v8464 = vsel %vm6792, %v8398, 0
  %v8467 = vsel %vm6792, %v8403, 0
  %v8470 = vsel %vm6792, %v8408, 0
  %v8473 = vsel %vm6792, %v8413, 0
  %v8476 = vsel %vm6792, %v8418, 0
  %v8479 = vsel %vm6792, %v8423, 0
  %v8482 = vsel %vm6792, %v8428, 0
  %v8485 = vsel %vm6792, %v8433, 0
  %8487 = vmatprep.subr.mxu0 0.0
  %8488 = vmatpush1.msra.mxu0 0.0
  %8489 = vmatprep.subr.mxu0 0.0
  %8490 = vmatpush1.msra.mxu0 0.0
  %8491 = vmatprep.subr.mxu0 0.0
  %8492 = vmatpush1.msra.mxu0 0.0
  %8493 = vmatprep.subr.mxu0 0.0
  %8494 = vmatpush1.msra.mxu0 0.0
  %8495 = vmatprep.subr.mxu0 0.0
  %8496 = vmatpush1.msra.mxu0 0.0
  %8497 = vmatprep.subr.mxu0 0.0
  %8498 = vmatpush1.msra.mxu0 0.0
  %8499 = vmatprep.subr.mxu0 0.0
  %8500 = vmatpush1.msra.mxu0 0.0
  %8501 = vmatprep.subr.mxu0 0.0
  %8502 = vmatpush1.msra.mxu0 0.0
  %8503 = vmatprep.subr.mxu0 0.0
  %8504 = vmatpush1.msra.mxu0 0.0
  %8505 = vmatprep.subr.mxu0 0.0
  %8506 = vmatpush1.msra.mxu0 0.0
  %8507 = vmatprep.subr.mxu0 0.0
  %8508 = vmatpush1.msra.mxu0 0.0
  %8509 = vmatprep.subr.mxu0 0.0
  %8510 = vmatpush1.msra.mxu0 0.0
  %8511 = vmatprep.subr.mxu0 0.0
  %8512 = vmatpush1.msra.mxu0 0.0
  %8513 = vmatprep.subr.mxu0 0.0
  %8514 = vmatpush1.msra.mxu0 0.0
  %8515 = vmatprep.subr.mxu0 0.0
  %8516 = vmatpush1.msra.mxu0 %v8438
  %8517 = vmatprep.subr.mxu0 0.0
  %8518 = vmatpush1.msra.mxu0 %v8437
  %8519 = vmatprep.subr.mxu0 0.0
  %8520 = vmatpush2.msra.mxu0 0.0
  %8521 = vmatprep.subr.mxu0 0.0
  %8522 = vmatpush2.msra.mxu0 0.0
  %8523 = vmatprep.subr.mxu0 0.0
  %8524 = vmatpush2.msra.mxu0 0.0
  %8525 = vmatprep.subr.mxu0 0.0
  %8526 = vmatpush2.msra.mxu0 0.0
  %8527 = vmatprep.subr.mxu0 0.0
  %8528 = vmatpush2.msra.mxu0 0.0
  %8529 = vmatprep.subr.mxu0 0.0
  %8530 = vmatpush2.msra.mxu0 0.0
  %8531 = vmatprep.subr.mxu0 0.0
  %8532 = vmatpush2.msra.mxu0 0.0
  %8533 = vmatprep.subr.mxu0 0.0
  %8534 = vmatpush2.msra.mxu0 0.0
  %8535 = vmatprep.subr.mxu0 0.0
  %8536 = vmatpush2.msra.mxu0 0.0
  %8537 = vmatprep.subr.mxu0 0.0
  %8538 = vmatpush2.msra.mxu0 0.0
  %8539 = vmatprep.subr.mxu0 0.0
  %8540 = vmatpush2.msra.mxu0 0.0
  %8541 = vmatprep.subr.mxu0 0.0
  %8542 = vmatpush2.msra.mxu0 0.0
  %8543 = vmatprep.subr.mxu0 0.0
  %8544 = vmatpush2.msra.mxu0 0.0
  %8545 = vmatprep.subr.mxu0 0.0
  %8546 = vmatpush2.msra.mxu0 0.0
  %8547 = vmatprep.subr.mxu0 0.0
  %8548 = vmatpush2.msra.mxu0 0.0
  %8549 = vmatprep.subr.mxu0 0.0
  %8550 = vmatpush2.msra.mxu0 0.0
  %8551 = vmatprep.mubr.f32.mxu0 0.0
  %8552 = vmatmul.mubr.f32.gmra.mxu0 %v8440
  %v8553 = vpop.f32.mrf.mxu0
  %v8554 = vadd.f32 0.0, %v8553
  %v8555 = vpop.f32.mrf.mxu0
  %8556 = vmatprep.mubr.f32.mxu0 0.0
  %8557 = vmatmul.mubr.f32.gmra.mxu0 %v8443
  %v8558 = vpop.f32.mrf.mxu0
  %v8559 = vadd.f32 0.0, %v8558
  %v8560 = vpop.f32.mrf.mxu0
  %8561 = vmatprep.mubr.f32.mxu0 0.0
  %8562 = vmatmul.mubr.f32.gmra.mxu0 %v8446
  %v8563 = vpop.f32.mrf.mxu0
  %v8564 = vadd.f32 0.0, %v8563
  %v8565 = vpop.f32.mrf.mxu0
  %8566 = vmatprep.mubr.f32.mxu0 0.0
  %8567 = vmatmul.mubr.f32.gmra.mxu0 %v8449
  %v8568 = vpop.f32.mrf.mxu0
  %v8569 = vadd.f32 0.0, %v8568
  %v8570 = vpop.f32.mrf.mxu0
  %8571 = vmatprep.mubr.f32.mxu0 0.0
  %8572 = vmatmul.mubr.f32.gmra.mxu0 %v8452
  %v8573 = vpop.f32.mrf.mxu0
  %v8574 = vadd.f32 0.0, %v8573
  %v8575 = vpop.f32.mrf.mxu0
  %8576 = vmatprep.mubr.f32.mxu0 0.0
  %8577 = vmatmul.mubr.f32.gmra.mxu0 %v8455
  %v8578 = vpop.f32.mrf.mxu0
  %v8579 = vadd.f32 0.0, %v8578
  %v8580 = vpop.f32.mrf.mxu0
  %8581 = vmatprep.mubr.f32.mxu0 0.0
  %8582 = vmatmul.mubr.f32.gmra.mxu0 %v8458
  %v8583 = vpop.f32.mrf.mxu0
  %v8584 = vadd.f32 0.0, %v8583
  %v8585 = vpop.f32.mrf.mxu0
  %8586 = vmatprep.mubr.f32.mxu0 0.0
  %8587 = vmatmul.mubr.f32.gmra.mxu0 %v8461
  %v8588 = vpop.f32.mrf.mxu0
  %v8589 = vadd.f32 0.0, %v8588
  %v8590 = vpop.f32.mrf.mxu0
  %8591 = vmatprep.mubr.f32.mxu0 0.0
  %8592 = vmatmul.mubr.f32.gmra.mxu0 %v8464
  %v8593 = vpop.f32.mrf.mxu0
  %v8594 = vadd.f32 0.0, %v8593
  %v8595 = vpop.f32.mrf.mxu0
  %8596 = vmatprep.mubr.f32.mxu0 0.0
  %8597 = vmatmul.mubr.f32.gmra.mxu0 %v8467
  %v8598 = vpop.f32.mrf.mxu0
  %v8599 = vadd.f32 0.0, %v8598
  %v8600 = vpop.f32.mrf.mxu0
  %8601 = vmatprep.mubr.f32.mxu0 0.0
  %8602 = vmatmul.mubr.f32.gmra.mxu0 %v8470
  %v8603 = vpop.f32.mrf.mxu0
  %v8604 = vadd.f32 0.0, %v8603
  %v8605 = vpop.f32.mrf.mxu0
  %8606 = vmatprep.mubr.f32.mxu0 0.0
  %8607 = vmatmul.mubr.f32.gmra.mxu0 %v8473
  %v8608 = vpop.f32.mrf.mxu0
  %v8609 = vadd.f32 0.0, %v8608
  %v8610 = vpop.f32.mrf.mxu0
  %8611 = vmatprep.mubr.f32.mxu0 0.0
  %8612 = vmatmul.mubr.f32.gmra.mxu0 %v8476
  %v8613 = vpop.f32.mrf.mxu0
  %v8614 = vadd.f32 0.0, %v8613
  %v8615 = vpop.f32.mrf.mxu0
  %8616 = vmatprep.mubr.f32.mxu0 0.0
  %8617 = vmatmul.mubr.f32.gmra.mxu0 %v8479
  %v8618 = vpop.f32.mrf.mxu0
  %v8619 = vadd.f32 0.0, %v8618
  %v8620 = vpop.f32.mrf.mxu0
  %8621 = vmatprep.mubr.f32.mxu0 0.0
  %8622 = vmatmul.mubr.f32.gmra.mxu0 %v8482
  %v8623 = vpop.f32.mrf.mxu0
  %v8624 = vadd.f32 0.0, %v8623
  %v8625 = vpop.f32.mrf.mxu0
  %8626 = vmatprep.mubr.f32.mxu0 0.0
  %8627 = vmatmul.mubr.f32.gmra.mxu0 %v8485
  %v8628 = vpop.f32.mrf.mxu0
  %v8629 = vadd.f32 0.0, %v8628
  %v8630 = vpop.f32.mrf.mxu0
  %8631 = vdwg.mxu0
  %v8632 = vadd.f32 %v8275, %v8554
  %v8633 = vadd.f32 %v8276, %v8559
  %v8634 = vadd.f32 %v8277, %v8564
  %v8635 = vadd.f32 %v8278, %v8569
  %v8636 = vadd.f32 %v8279, %v8574
  %v8637 = vadd.f32 %v8280, %v8579
  %v8638 = vadd.f32 %v8281, %v8584
  %v8639 = vadd.f32 %v8282, %v8589
  %v8640 = vadd.f32 %v8283, %v8594
  %v8641 = vadd.f32 %v8284, %v8599
  %v8642 = vadd.f32 %v8285, %v8604
  %v8643 = vadd.f32 %v8286, %v8609
  %v8644 = vadd.f32 %v8287, %v8614
  %v8645 = vadd.f32 %v8288, %v8619
  %v8646 = vadd.f32 %v8289, %v8624
  %v8647 = vadd.f32 %v8290, %v8629
  %8648 = vmatprep.subr.mxu0 0.0
  %8649 = vmatpush1.msra.mxu0 %v6643
  %8650 = vmatprep.subr.mxu0 0.0
  %8651 = vmatpush1.msra.mxu0 %v6642
  %8652 = vmatprep.subr.mxu0 0.0
  %8653 = vmatpush1.msra.mxu0 %v6641
  %8654 = vmatprep.subr.mxu0 0.0
  %8655 = vmatpush1.msra.mxu0 %v6640
  %8656 = vmatprep.subr.mxu0 0.0
  %8657 = vmatpush1.msra.mxu0 %v6639
  %8658 = vmatprep.subr.mxu0 0.0
  %8659 = vmatpush1.msra.mxu0 %v6638
  %8660 = vmatprep.subr.mxu0 0.0
  %8661 = vmatpush1.msra.mxu0 %v6637
  %8662 = vmatprep.subr.mxu0 0.0
  %8663 = vmatpush1.msra.mxu0 %v6636
  %8664 = vmatprep.subr.mxu0 0.0
  %8665 = vmatpush1.msra.mxu0 %v6635
  %8666 = vmatprep.subr.mxu0 0.0
  %8667 = vmatpush1.msra.mxu0 %v6634
  %8668 = vmatprep.subr.mxu0 0.0
  %8669 = vmatpush1.msra.mxu0 %v6633
  %8670 = vmatprep.subr.mxu0 0.0
  %8671 = vmatpush1.msra.mxu0 %v6632
  %8672 = vmatprep.subr.mxu0 0.0
  %8673 = vmatpush1.msra.mxu0 %v6631
  %8674 = vmatprep.subr.mxu0 0.0
  %8675 = vmatpush1.msra.mxu0 %v6630
  %8676 = vmatprep.subr.mxu0 0.0
  %8677 = vmatpush1.msra.mxu0 %v6629
  %8678 = vmatprep.subr.mxu0 0.0
  %8679 = vmatpush1.msra.mxu0 %v6628
  %8680 = vmatprep.subr.mxu0 0.0
  %8681 = vmatpush2.msra.mxu0 0.0
  %8682 = vmatprep.subr.mxu0 0.0
  %8683 = vmatpush2.msra.mxu0 0.0
  %8684 = vmatprep.subr.mxu0 0.0
  %8685 = vmatpush2.msra.mxu0 0.0
  %8686 = vmatprep.subr.mxu0 0.0
  %8687 = vmatpush2.msra.mxu0 0.0
  %8688 = vmatprep.subr.mxu0 0.0
  %8689 = vmatpush2.msra.mxu0 0.0
  %8690 = vmatprep.subr.mxu0 0.0
  %8691 = vmatpush2.msra.mxu0 0.0
  %8692 = vmatprep.subr.mxu0 0.0
  %8693 = vmatpush2.msra.mxu0 0.0
  %8694 = vmatprep.subr.mxu0 0.0
  %8695 = vmatpush2.msra.mxu0 0.0
  %8696 = vmatprep.subr.mxu0 0.0
  %8697 = vmatpush2.msra.mxu0 0.0
  %8698 = vmatprep.subr.mxu0 0.0
  %8699 = vmatpush2.msra.mxu0 0.0
  %8700 = vmatprep.subr.mxu0 0.0
  %8701 = vmatpush2.msra.mxu0 0.0
  %8702 = vmatprep.subr.mxu0 0.0
  %8703 = vmatpush2.msra.mxu0 0.0
  %8704 = vmatprep.subr.mxu0 0.0
  %8705 = vmatpush2.msra.mxu0 0.0
  %8706 = vmatprep.subr.mxu0 0.0
  %8707 = vmatpush2.msra.mxu0 0.0
  %8708 = vmatprep.subr.mxu0 0.0
  %8709 = vmatpush2.msra.mxu0 0.0
  %8710 = vmatprep.subr.mxu0 0.0
  %8711 = vmatpush2.msra.mxu0 0.0
  %8712 = vmatprep.mubr.f32.mxu0 0.0
  %8713 = vmatmul.mubr.f32.gmra.mxu0 %v2393
  %v8714 = vpop.f32.mrf.mxu0
  %v8715 = vadd.f32 0.0, %v8714
  %v8716 = vpop.f32.mrf.mxu0
  %8717 = vmatprep.mubr.f32.mxu0 0.0
  %8718 = vmatmul.mubr.f32.gmra.mxu0 %v2394
  %v8719 = vpop.f32.mrf.mxu0
  %v8720 = vadd.f32 0.0, %v8719
  %v8721 = vpop.f32.mrf.mxu0
  %8722 = vmatprep.mubr.f32.mxu0 0.0
  %8723 = vmatmul.mubr.f32.gmra.mxu0 %v2395
  %v8724 = vpop.f32.mrf.mxu0
  %v8725 = vadd.f32 0.0, %v8724
  %v8726 = vpop.f32.mrf.mxu0
  %8727 = vmatprep.mubr.f32.mxu0 0.0
  %8728 = vmatmul.mubr.f32.gmra.mxu0 %v2396
  %v8729 = vpop.f32.mrf.mxu0
  %v8730 = vadd.f32 0.0, %v8729
  %v8731 = vpop.f32.mrf.mxu0
  %8732 = vmatprep.mubr.f32.mxu0 0.0
  %8733 = vmatmul.mubr.f32.gmra.mxu0 %v2397
  %v8734 = vpop.f32.mrf.mxu0
  %v8735 = vadd.f32 0.0, %v8734
  %v8736 = vpop.f32.mrf.mxu0
  %8737 = vmatprep.mubr.f32.mxu0 0.0
  %8738 = vmatmul.mubr.f32.gmra.mxu0 %v2398
  %v8739 = vpop.f32.mrf.mxu0
  %v8740 = vadd.f32 0.0, %v8739
  %v8741 = vpop.f32.mrf.mxu0
  %8742 = vmatprep.mubr.f32.mxu0 0.0
  %8743 = vmatmul.mubr.f32.gmra.mxu0 %v2399
  %v8744 = vpop.f32.mrf.mxu0
  %v8745 = vadd.f32 0.0, %v8744
  %v8746 = vpop.f32.mrf.mxu0
  %8747 = vmatprep.mubr.f32.mxu0 0.0
  %8748 = vmatmul.mubr.f32.gmra.mxu0 %v2400
  %v8749 = vpop.f32.mrf.mxu0
  %v8750 = vadd.f32 0.0, %v8749
  %v8751 = vpop.f32.mrf.mxu0
  %8752 = vmatprep.mubr.f32.mxu0 0.0
  %8753 = vmatmul.mubr.f32.gmra.mxu0 %v2401
  %v8754 = vpop.f32.mrf.mxu0
  %v8755 = vadd.f32 0.0, %v8754
  %v8756 = vpop.f32.mrf.mxu0
  %8757 = vmatprep.mubr.f32.mxu0 0.0
  %8758 = vmatmul.mubr.f32.gmra.mxu0 %v2402
  %v8759 = vpop.f32.mrf.mxu0
  %v8760 = vadd.f32 0.0, %v8759
  %v8761 = vpop.f32.mrf.mxu0
  %8762 = vmatprep.mubr.f32.mxu0 0.0
  %8763 = vmatmul.mubr.f32.gmra.mxu0 %v2403
  %v8764 = vpop.f32.mrf.mxu0
  %v8765 = vadd.f32 0.0, %v8764
  %v8766 = vpop.f32.mrf.mxu0
  %8767 = vmatprep.mubr.f32.mxu0 0.0
  %8768 = vmatmul.mubr.f32.gmra.mxu0 %v2404
  %v8769 = vpop.f32.mrf.mxu0
  %v8770 = vadd.f32 0.0, %v8769
  %v8771 = vpop.f32.mrf.mxu0
  %8772 = vmatprep.mubr.f32.mxu0 0.0
  %8773 = vmatmul.mubr.f32.gmra.mxu0 %v2405
  %v8774 = vpop.f32.mrf.mxu0
  %v8775 = vadd.f32 0.0, %v8774
  %v8776 = vpop.f32.mrf.mxu0
  %8777 = vmatprep.mubr.f32.mxu0 0.0
  %8778 = vmatmul.mubr.f32.gmra.mxu0 %v2406
  %v8779 = vpop.f32.mrf.mxu0
  %v8780 = vadd.f32 0.0, %v8779
  %v8781 = vpop.f32.mrf.mxu0
  %8782 = vmatprep.mubr.f32.mxu0 0.0
  %8783 = vmatmul.mubr.f32.gmra.mxu0 %v2407
  %v8784 = vpop.f32.mrf.mxu0
  %v8785 = vadd.f32 0.0, %v8784
  %v8786 = vpop.f32.mrf.mxu0
  %8787 = vmatprep.mubr.f32.mxu0 0.0
  %8788 = vmatmul.mubr.f32.gmra.mxu0 %v2408
  %v8789 = vpop.f32.mrf.mxu0
  %v8790 = vadd.f32 0.0, %v8789
  %v8791 = vpop.f32.mrf.mxu0
  %8792 = vdwg.mxu0
  %s8793 = scalar_lea.vmem %s8, 96
  %v8794 = vld [vmem:[%s8793] sm:$0xff]
  %v8795 = vld [vmem:[%s8793 + $0x8] sm:$0xff]
  %v8797 = vsel %vm6792, %v8715, 0
  %v8800 = vsel %vm6792, %v8720, 0
  %v8803 = vsel %vm6792, %v8725, 0
  %v8806 = vsel %vm6792, %v8730, 0
  %v8809 = vsel %vm6792, %v8735, 0
  %v8812 = vsel %vm6792, %v8740, 0
  %v8815 = vsel %vm6792, %v8745, 0
  %v8818 = vsel %vm6792, %v8750, 0
  %v8821 = vsel %vm6792, %v8755, 0
  %v8824 = vsel %vm6792, %v8760, 0
  %v8827 = vsel %vm6792, %v8765, 0
  %v8830 = vsel %vm6792, %v8770, 0
  %v8833 = vsel %vm6792, %v8775, 0
  %v8836 = vsel %vm6792, %v8780, 0
  %v8839 = vsel %vm6792, %v8785, 0
  %v8842 = vsel %vm6792, %v8790, 0
  %8844 = vmatprep.subr.mxu0 0.0
  %8845 = vmatpush1.msra.mxu0 0.0
  %8846 = vmatprep.subr.mxu0 0.0
  %8847 = vmatpush1.msra.mxu0 0.0
  %8848 = vmatprep.subr.mxu0 0.0
  %8849 = vmatpush1.msra.mxu0 0.0
  %8850 = vmatprep.subr.mxu0 0.0
  %8851 = vmatpush1.msra.mxu0 0.0
  %8852 = vmatprep.subr.mxu0 0.0
  %8853 = vmatpush1.msra.mxu0 0.0
  %8854 = vmatprep.subr.mxu0 0.0
  %8855 = vmatpush1.msra.mxu0 0.0
  %8856 = vmatprep.subr.mxu0 0.0
  %8857 = vmatpush1.msra.mxu0 0.0
  %8858 = vmatprep.subr.mxu0 0.0
  %8859 = vmatpush1.msra.mxu0 0.0
  %8860 = vmatprep.subr.mxu0 0.0
  %8861 = vmatpush1.msra.mxu0 0.0
  %8862 = vmatprep.subr.mxu0 0.0
  %8863 = vmatpush1.msra.mxu0 0.0
  %8864 = vmatprep.subr.mxu0 0.0
  %8865 = vmatpush1.msra.mxu0 0.0
  %8866 = vmatprep.subr.mxu0 0.0
  %8867 = vmatpush1.msra.mxu0 0.0
  %8868 = vmatprep.subr.mxu0 0.0
  %8869 = vmatpush1.msra.mxu0 0.0
  %8870 = vmatprep.subr.mxu0 0.0
  %8871 = vmatpush1.msra.mxu0 0.0
  %8872 = vmatprep.subr.mxu0 0.0
  %8873 = vmatpush1.msra.mxu0 %v8795
  %8874 = vmatprep.subr.mxu0 0.0
  %8875 = vmatpush1.msra.mxu0 %v8794
  %8876 = vmatprep.subr.mxu0 0.0
  %8877 = vmatpush2.msra.mxu0 0.0
  %8878 = vmatprep.subr.mxu0 0.0
  %8879 = vmatpush2.msra.mxu0 0.0
  %8880 = vmatprep.subr.mxu0 0.0
  %8881 = vmatpush2.msra.mxu0 0.0
  %8882 = vmatprep.subr.mxu0 0.0
  %8883 = vmatpush2.msra.mxu0 0.0
  %8884 = vmatprep.subr.mxu0 0.0
  %8885 = vmatpush2.msra.mxu0 0.0
  %8886 = vmatprep.subr.mxu0 0.0
  %8887 = vmatpush2.msra.mxu0 0.0
  %8888 = vmatprep.subr.mxu0 0.0
  %8889 = vmatpush2.msra.mxu0 0.0
  %8890 = vmatprep.subr.mxu0 0.0
  %8891 = vmatpush2.msra.mxu0 0.0
  %8892 = vmatprep.subr.mxu0 0.0
  %8893 = vmatpush2.msra.mxu0 0.0
  %8894 = vmatprep.subr.mxu0 0.0
  %8895 = vmatpush2.msra.mxu0 0.0
  %8896 = vmatprep.subr.mxu0 0.0
  %8897 = vmatpush2.msra.mxu0 0.0
  %8898 = vmatprep.subr.mxu0 0.0
  %8899 = vmatpush2.msra.mxu0 0.0
  %8900 = vmatprep.subr.mxu0 0.0
  %8901 = vmatpush2.msra.mxu0 0.0
  %8902 = vmatprep.subr.mxu0 0.0
  %8903 = vmatpush2.msra.mxu0 0.0
  %8904 = vmatprep.subr.mxu0 0.0
  %8905 = vmatpush2.msra.mxu0 0.0
  %8906 = vmatprep.subr.mxu0 0.0
  %8907 = vmatpush2.msra.mxu0 0.0
  %8908 = vmatprep.mubr.f32.mxu0 0.0
  %8909 = vmatmul.mubr.f32.gmra.mxu0 %v8797
  %v8910 = vpop.f32.mrf.mxu0
  %v8911 = vadd.f32 0.0, %v8910
  %v8912 = vpop.f32.mrf.mxu0
  %8913 = vmatprep.mubr.f32.mxu0 0.0
  %8914 = vmatmul.mubr.f32.gmra.mxu0 %v8800
  %v8915 = vpop.f32.mrf.mxu0
  %v8916 = vadd.f32 0.0, %v8915
  %v8917 = vpop.f32.mrf.mxu0
  %8918 = vmatprep.mubr.f32.mxu0 0.0
  %8919 = vmatmul.mubr.f32.gmra.mxu0 %v8803
  %v8920 = vpop.f32.mrf.mxu0
  %v8921 = vadd.f32 0.0, %v8920
  %v8922 = vpop.f32.mrf.mxu0
  %8923 = vmatprep.mubr.f32.mxu0 0.0
  %8924 = vmatmul.mubr.f32.gmra.mxu0 %v8806
  %v8925 = vpop.f32.mrf.mxu0
  %v8926 = vadd.f32 0.0, %v8925
  %v8927 = vpop.f32.mrf.mxu0
  %8928 = vmatprep.mubr.f32.mxu0 0.0
  %8929 = vmatmul.mubr.f32.gmra.mxu0 %v8809
  %v8930 = vpop.f32.mrf.mxu0
  %v8931 = vadd.f32 0.0, %v8930
  %v8932 = vpop.f32.mrf.mxu0
  %8933 = vmatprep.mubr.f32.mxu0 0.0
  %8934 = vmatmul.mubr.f32.gmra.mxu0 %v8812
  %v8935 = vpop.f32.mrf.mxu0
  %v8936 = vadd.f32 0.0, %v8935
  %v8937 = vpop.f32.mrf.mxu0
  %8938 = vmatprep.mubr.f32.mxu0 0.0
  %8939 = vmatmul.mubr.f32.gmra.mxu0 %v8815
  %v8940 = vpop.f32.mrf.mxu0
  %v8941 = vadd.f32 0.0, %v8940
  %v8942 = vpop.f32.mrf.mxu0
  %8943 = vmatprep.mubr.f32.mxu0 0.0
  %8944 = vmatmul.mubr.f32.gmra.mxu0 %v8818
  %v8945 = vpop.f32.mrf.mxu0
  %v8946 = vadd.f32 0.0, %v8945
  %v8947 = vpop.f32.mrf.mxu0
  %8948 = vmatprep.mubr.f32.mxu0 0.0
  %8949 = vmatmul.mubr.f32.gmra.mxu0 %v8821
  %v8950 = vpop.f32.mrf.mxu0
  %v8951 = vadd.f32 0.0, %v8950
  %v8952 = vpop.f32.mrf.mxu0
  %8953 = vmatprep.mubr.f32.mxu0 0.0
  %8954 = vmatmul.mubr.f32.gmra.mxu0 %v8824
  %v8955 = vpop.f32.mrf.mxu0
  %v8956 = vadd.f32 0.0, %v8955
  %v8957 = vpop.f32.mrf.mxu0
  %8958 = vmatprep.mubr.f32.mxu0 0.0
  %8959 = vmatmul.mubr.f32.gmra.mxu0 %v8827
  %v8960 = vpop.f32.mrf.mxu0
  %v8961 = vadd.f32 0.0, %v8960
  %v8962 = vpop.f32.mrf.mxu0
  %8963 = vmatprep.mubr.f32.mxu0 0.0
  %8964 = vmatmul.mubr.f32.gmra.mxu0 %v8830
  %v8965 = vpop.f32.mrf.mxu0
  %v8966 = vadd.f32 0.0, %v8965
  %v8967 = vpop.f32.mrf.mxu0
  %8968 = vmatprep.mubr.f32.mxu0 0.0
  %8969 = vmatmul.mubr.f32.gmra.mxu0 %v8833
  %v8970 = vpop.f32.mrf.mxu0
  %v8971 = vadd.f32 0.0, %v8970
  %v8972 = vpop.f32.mrf.mxu0
  %8973 = vmatprep.mubr.f32.mxu0 0.0
  %8974 = vmatmul.mubr.f32.gmra.mxu0 %v8836
  %v8975 = vpop.f32.mrf.mxu0
  %v8976 = vadd.f32 0.0, %v8975
  %v8977 = vpop.f32.mrf.mxu0
  %8978 = vmatprep.mubr.f32.mxu0 0.0
  %8979 = vmatmul.mubr.f32.gmra.mxu0 %v8839
  %v8980 = vpop.f32.mrf.mxu0
  %v8981 = vadd.f32 0.0, %v8980
  %v8982 = vpop.f32.mrf.mxu0
  %8983 = vmatprep.mubr.f32.mxu0 0.0
  %8984 = vmatmul.mubr.f32.gmra.mxu0 %v8842
  %v8985 = vpop.f32.mrf.mxu0
  %v8986 = vadd.f32 0.0, %v8985
  %v8987 = vpop.f32.mrf.mxu0
  %8988 = vdwg.mxu0
  %v8989 = vadd.f32 %v8632, %v8911
  %v8990 = vadd.f32 %v8633, %v8916
  %v8991 = vadd.f32 %v8634, %v8921
  %v8992 = vadd.f32 %v8635, %v8926
  %v8993 = vadd.f32 %v8636, %v8931
  %v8994 = vadd.f32 %v8637, %v8936
  %v8995 = vadd.f32 %v8638, %v8941
  %v8996 = vadd.f32 %v8639, %v8946
  %v8997 = vadd.f32 %v8640, %v8951
  %v8998 = vadd.f32 %v8641, %v8956
  %v8999 = vadd.f32 %v8642, %v8961
  %v9000 = vadd.f32 %v8643, %v8966
  %v9001 = vadd.f32 %v8644, %v8971
  %v9002 = vadd.f32 %v8645, %v8976
  %v9003 = vadd.f32 %v8646, %v8981
  %v9004 = vadd.f32 %v8647, %v8986
  %9005 = vmatprep.subr.mxu0 0.0
  %9006 = vmatpush1.msra.mxu0 %v6643
  %9007 = vmatprep.subr.mxu0 0.0
  %9008 = vmatpush1.msra.mxu0 %v6642
  %9009 = vmatprep.subr.mxu0 0.0
  %9010 = vmatpush1.msra.mxu0 %v6641
  %9011 = vmatprep.subr.mxu0 0.0
  %9012 = vmatpush1.msra.mxu0 %v6640
  %9013 = vmatprep.subr.mxu0 0.0
  %9014 = vmatpush1.msra.mxu0 %v6639
  %9015 = vmatprep.subr.mxu0 0.0
  %9016 = vmatpush1.msra.mxu0 %v6638
  %9017 = vmatprep.subr.mxu0 0.0
  %9018 = vmatpush1.msra.mxu0 %v6637
  %9019 = vmatprep.subr.mxu0 0.0
  %9020 = vmatpush1.msra.mxu0 %v6636
  %9021 = vmatprep.subr.mxu0 0.0
  %9022 = vmatpush1.msra.mxu0 %v6635
  %9023 = vmatprep.subr.mxu0 0.0
  %9024 = vmatpush1.msra.mxu0 %v6634
  %9025 = vmatprep.subr.mxu0 0.0
  %9026 = vmatpush1.msra.mxu0 %v6633
  %9027 = vmatprep.subr.mxu0 0.0
  %9028 = vmatpush1.msra.mxu0 %v6632
  %9029 = vmatprep.subr.mxu0 0.0
  %9030 = vmatpush1.msra.mxu0 %v6631
  %9031 = vmatprep.subr.mxu0 0.0
  %9032 = vmatpush1.msra.mxu0 %v6630
  %9033 = vmatprep.subr.mxu0 0.0
  %9034 = vmatpush1.msra.mxu0 %v6629
  %9035 = vmatprep.subr.mxu0 0.0
  %9036 = vmatpush1.msra.mxu0 %v6628
  %9037 = vmatprep.subr.mxu0 0.0
  %9038 = vmatpush2.msra.mxu0 0.0
  %9039 = vmatprep.subr.mxu0 0.0
  %9040 = vmatpush2.msra.mxu0 0.0
  %9041 = vmatprep.subr.mxu0 0.0
  %9042 = vmatpush2.msra.mxu0 0.0
  %9043 = vmatprep.subr.mxu0 0.0
  %9044 = vmatpush2.msra.mxu0 0.0
  %9045 = vmatprep.subr.mxu0 0.0
  %9046 = vmatpush2.msra.mxu0 0.0
  %9047 = vmatprep.subr.mxu0 0.0
  %9048 = vmatpush2.msra.mxu0 0.0
  %9049 = vmatprep.subr.mxu0 0.0
  %9050 = vmatpush2.msra.mxu0 0.0
  %9051 = vmatprep.subr.mxu0 0.0
  %9052 = vmatpush2.msra.mxu0 0.0
  %9053 = vmatprep.subr.mxu0 0.0
  %9054 = vmatpush2.msra.mxu0 0.0
  %9055 = vmatprep.subr.mxu0 0.0
  %9056 = vmatpush2.msra.mxu0 0.0
  %9057 = vmatprep.subr.mxu0 0.0
  %9058 = vmatpush2.msra.mxu0 0.0
  %9059 = vmatprep.subr.mxu0 0.0
  %9060 = vmatpush2.msra.mxu0 0.0
  %9061 = vmatprep.subr.mxu0 0.0
  %9062 = vmatpush2.msra.mxu0 0.0
  %9063 = vmatprep.subr.mxu0 0.0
  %9064 = vmatpush2.msra.mxu0 0.0
  %9065 = vmatprep.subr.mxu0 0.0
  %9066 = vmatpush2.msra.mxu0 0.0
  %9067 = vmatprep.subr.mxu0 0.0
  %9068 = vmatpush2.msra.mxu0 0.0
  %9069 = vmatprep.mubr.f32.mxu0 0.0
  %9070 = vmatmul.mubr.f32.gmra.mxu0 %v2769
  %v9071 = vpop.f32.mrf.mxu0
  %v9072 = vadd.f32 0.0, %v9071
  %v9073 = vpop.f32.mrf.mxu0
  %9074 = vmatprep.mubr.f32.mxu0 0.0
  %9075 = vmatmul.mubr.f32.gmra.mxu0 %v2770
  %v9076 = vpop.f32.mrf.mxu0
  %v9077 = vadd.f32 0.0, %v9076
  %v9078 = vpop.f32.mrf.mxu0
  %9079 = vmatprep.mubr.f32.mxu0 0.0
  %9080 = vmatmul.mubr.f32.gmra.mxu0 %v2771
  %v9081 = vpop.f32.mrf.mxu0
  %v9082 = vadd.f32 0.0, %v9081
  %v9083 = vpop.f32.mrf.mxu0
  %9084 = vmatprep.mubr.f32.mxu0 0.0
  %9085 = vmatmul.mubr.f32.gmra.mxu0 %v2772
  %v9086 = vpop.f32.mrf.mxu0
  %v9087 = vadd.f32 0.0, %v9086
  %v9088 = vpop.f32.mrf.mxu0
  %9089 = vmatprep.mubr.f32.mxu0 0.0
  %9090 = vmatmul.mubr.f32.gmra.mxu0 %v2773
  %v9091 = vpop.f32.mrf.mxu0
  %v9092 = vadd.f32 0.0, %v9091
  %v9093 = vpop.f32.mrf.mxu0
  %9094 = vmatprep.mubr.f32.mxu0 0.0
  %9095 = vmatmul.mubr.f32.gmra.mxu0 %v2774
  %v9096 = vpop.f32.mrf.mxu0
  %v9097 = vadd.f32 0.0, %v9096
  %v9098 = vpop.f32.mrf.mxu0
  %9099 = vmatprep.mubr.f32.mxu0 0.0
  %9100 = vmatmul.mubr.f32.gmra.mxu0 %v2775
  %v9101 = vpop.f32.mrf.mxu0
  %v9102 = vadd.f32 0.0, %v9101
  %v9103 = vpop.f32.mrf.mxu0
  %9104 = vmatprep.mubr.f32.mxu0 0.0
  %9105 = vmatmul.mubr.f32.gmra.mxu0 %v2776
  %v9106 = vpop.f32.mrf.mxu0
  %v9107 = vadd.f32 0.0, %v9106
  %v9108 = vpop.f32.mrf.mxu0
  %9109 = vmatprep.mubr.f32.mxu0 0.0
  %9110 = vmatmul.mubr.f32.gmra.mxu0 %v2777
  %v9111 = vpop.f32.mrf.mxu0
  %v9112 = vadd.f32 0.0, %v9111
  %v9113 = vpop.f32.mrf.mxu0
  %9114 = vmatprep.mubr.f32.mxu0 0.0
  %9115 = vmatmul.mubr.f32.gmra.mxu0 %v2778
  %v9116 = vpop.f32.mrf.mxu0
  %v9117 = vadd.f32 0.0, %v9116
  %v9118 = vpop.f32.mrf.mxu0
  %9119 = vmatprep.mubr.f32.mxu0 0.0
  %9120 = vmatmul.mubr.f32.gmra.mxu0 %v2779
  %v9121 = vpop.f32.mrf.mxu0
  %v9122 = vadd.f32 0.0, %v9121
  %v9123 = vpop.f32.mrf.mxu0
  %9124 = vmatprep.mubr.f32.mxu0 0.0
  %9125 = vmatmul.mubr.f32.gmra.mxu0 %v2780
  %v9126 = vpop.f32.mrf.mxu0
  %v9127 = vadd.f32 0.0, %v9126
  %v9128 = vpop.f32.mrf.mxu0
  %9129 = vmatprep.mubr.f32.mxu0 0.0
  %9130 = vmatmul.mubr.f32.gmra.mxu0 %v2781
  %v9131 = vpop.f32.mrf.mxu0
  %v9132 = vadd.f32 0.0, %v9131
  %v9133 = vpop.f32.mrf.mxu0
  %9134 = vmatprep.mubr.f32.mxu0 0.0
  %9135 = vmatmul.mubr.f32.gmra.mxu0 %v2782
  %v9136 = vpop.f32.mrf.mxu0
  %v9137 = vadd.f32 0.0, %v9136
  %v9138 = vpop.f32.mrf.mxu0
  %9139 = vmatprep.mubr.f32.mxu0 0.0
  %9140 = vmatmul.mubr.f32.gmra.mxu0 %v2783
  %v9141 = vpop.f32.mrf.mxu0
  %v9142 = vadd.f32 0.0, %v9141
  %v9143 = vpop.f32.mrf.mxu0
  %9144 = vmatprep.mubr.f32.mxu0 0.0
  %9145 = vmatmul.mubr.f32.gmra.mxu0 %v2784
  %v9146 = vpop.f32.mrf.mxu0
  %v9147 = vadd.f32 0.0, %v9146
  %v9148 = vpop.f32.mrf.mxu0
  %9149 = vdwg.mxu0
  %s9150 = scalar_lea.vmem %s8, 112
  %v9151 = vld [vmem:[%s9150] sm:$0xff]
  %v9152 = vld [vmem:[%s9150 + $0x8] sm:$0xff]
  %v9154 = vsel %vm6792, %v9072, 0
  %v9157 = vsel %vm6792, %v9077, 0
  %v9160 = vsel %vm6792, %v9082, 0
  %v9163 = vsel %vm6792, %v9087, 0
  %v9166 = vsel %vm6792, %v9092, 0
  %v9169 = vsel %vm6792, %v9097, 0
  %v9172 = vsel %vm6792, %v9102, 0
  %v9175 = vsel %vm6792, %v9107, 0
  %v9178 = vsel %vm6792, %v9112, 0
  %v9181 = vsel %vm6792, %v9117, 0
  %v9184 = vsel %vm6792, %v9122, 0
  %v9187 = vsel %vm6792, %v9127, 0
  %v9190 = vsel %vm6792, %v9132, 0
  %v9193 = vsel %vm6792, %v9137, 0
  %v9196 = vsel %vm6792, %v9142, 0
  %v9199 = vsel %vm6792, %v9147, 0
  %9201 = vmatprep.subr.mxu0 0.0
  %9202 = vmatpush1.msra.mxu0 0.0
  %9203 = vmatprep.subr.mxu0 0.0
  %9204 = vmatpush1.msra.mxu0 0.0
  %9205 = vmatprep.subr.mxu0 0.0
  %9206 = vmatpush1.msra.mxu0 0.0
  %9207 = vmatprep.subr.mxu0 0.0
  %9208 = vmatpush1.msra.mxu0 0.0
  %9209 = vmatprep.subr.mxu0 0.0
  %9210 = vmatpush1.msra.mxu0 0.0
  %9211 = vmatprep.subr.mxu0 0.0
  %9212 = vmatpush1.msra.mxu0 0.0
  %9213 = vmatprep.subr.mxu0 0.0
  %9214 = vmatpush1.msra.mxu0 0.0
  %9215 = vmatprep.subr.mxu0 0.0
  %9216 = vmatpush1.msra.mxu0 0.0
  %9217 = vmatprep.subr.mxu0 0.0
  %9218 = vmatpush1.msra.mxu0 0.0
  %9219 = vmatprep.subr.mxu0 0.0
  %9220 = vmatpush1.msra.mxu0 0.0
  %9221 = vmatprep.subr.mxu0 0.0
  %9222 = vmatpush1.msra.mxu0 0.0
  %9223 = vmatprep.subr.mxu0 0.0
  %9224 = vmatpush1.msra.mxu0 0.0
  %9225 = vmatprep.subr.mxu0 0.0
  %9226 = vmatpush1.msra.mxu0 0.0
  %9227 = vmatprep.subr.mxu0 0.0
  %9228 = vmatpush1.msra.mxu0 0.0
  %9229 = vmatprep.subr.mxu0 0.0
  %9230 = vmatpush1.msra.mxu0 %v9152
  %9231 = vmatprep.subr.mxu0 0.0
  %9232 = vmatpush1.msra.mxu0 %v9151
  %9233 = vmatprep.subr.mxu0 0.0
  %9234 = vmatpush2.msra.mxu0 0.0
  %9235 = vmatprep.subr.mxu0 0.0
  %9236 = vmatpush2.msra.mxu0 0.0
  %9237 = vmatprep.subr.mxu0 0.0
  %9238 = vmatpush2.msra.mxu0 0.0
  %9239 = vmatprep.subr.mxu0 0.0
  %9240 = vmatpush2.msra.mxu0 0.0
  %9241 = vmatprep.subr.mxu0 0.0
  %9242 = vmatpush2.msra.mxu0 0.0
  %9243 = vmatprep.subr.mxu0 0.0
  %9244 = vmatpush2.msra.mxu0 0.0
  %9245 = vmatprep.subr.mxu0 0.0
  %9246 = vmatpush2.msra.mxu0 0.0
  %9247 = vmatprep.subr.mxu0 0.0
  %9248 = vmatpush2.msra.mxu0 0.0
  %9249 = vmatprep.subr.mxu0 0.0
  %9250 = vmatpush2.msra.mxu0 0.0
  %9251 = vmatprep.subr.mxu0 0.0
  %9252 = vmatpush2.msra.mxu0 0.0
  %9253 = vmatprep.subr.mxu0 0.0
  %9254 = vmatpush2.msra.mxu0 0.0
  %9255 = vmatprep.subr.mxu0 0.0
  %9256 = vmatpush2.msra.mxu0 0.0
  %9257 = vmatprep.subr.mxu0 0.0
  %9258 = vmatpush2.msra.mxu0 0.0
  %9259 = vmatprep.subr.mxu0 0.0
  %9260 = vmatpush2.msra.mxu0 0.0
  %9261 = vmatprep.subr.mxu0 0.0
  %9262 = vmatpush2.msra.mxu0 0.0
  %9263 = vmatprep.subr.mxu0 0.0
  %9264 = vmatpush2.msra.mxu0 0.0
  %9265 = vmatprep.mubr.f32.mxu0 0.0
  %9266 = vmatmul.mubr.f32.gmra.mxu0 %v9154
  %v9267 = vpop.f32.mrf.mxu0
  %v9268 = vadd.f32 0.0, %v9267
  %v9269 = vpop.f32.mrf.mxu0
  %9270 = vmatprep.mubr.f32.mxu0 0.0
  %9271 = vmatmul.mubr.f32.gmra.mxu0 %v9157
  %v9272 = vpop.f32.mrf.mxu0
  %v9273 = vadd.f32 0.0, %v9272
  %v9274 = vpop.f32.mrf.mxu0
  %9275 = vmatprep.mubr.f32.mxu0 0.0
  %9276 = vmatmul.mubr.f32.gmra.mxu0 %v9160
  %v9277 = vpop.f32.mrf.mxu0
  %v9278 = vadd.f32 0.0, %v9277
  %v9279 = vpop.f32.mrf.mxu0
  %9280 = vmatprep.mubr.f32.mxu0 0.0
  %9281 = vmatmul.mubr.f32.gmra.mxu0 %v9163
  %v9282 = vpop.f32.mrf.mxu0
  %v9283 = vadd.f32 0.0, %v9282
  %v9284 = vpop.f32.mrf.mxu0
  %9285 = vmatprep.mubr.f32.mxu0 0.0
  %9286 = vmatmul.mubr.f32.gmra.mxu0 %v9166
  %v9287 = vpop.f32.mrf.mxu0
  %v9288 = vadd.f32 0.0, %v9287
  %v9289 = vpop.f32.mrf.mxu0
  %9290 = vmatprep.mubr.f32.mxu0 0.0
  %9291 = vmatmul.mubr.f32.gmra.mxu0 %v9169
  %v9292 = vpop.f32.mrf.mxu0
  %v9293 = vadd.f32 0.0, %v9292
  %v9294 = vpop.f32.mrf.mxu0
  %9295 = vmatprep.mubr.f32.mxu0 0.0
  %9296 = vmatmul.mubr.f32.gmra.mxu0 %v9172
  %v9297 = vpop.f32.mrf.mxu0
  %v9298 = vadd.f32 0.0, %v9297
  %v9299 = vpop.f32.mrf.mxu0
  %9300 = vmatprep.mubr.f32.mxu0 0.0
  %9301 = vmatmul.mubr.f32.gmra.mxu0 %v9175
  %v9302 = vpop.f32.mrf.mxu0
  %v9303 = vadd.f32 0.0, %v9302
  %v9304 = vpop.f32.mrf.mxu0
  %9305 = vmatprep.mubr.f32.mxu0 0.0
  %9306 = vmatmul.mubr.f32.gmra.mxu0 %v9178
  %v9307 = vpop.f32.mrf.mxu0
  %v9308 = vadd.f32 0.0, %v9307
  %v9309 = vpop.f32.mrf.mxu0
  %9310 = vmatprep.mubr.f32.mxu0 0.0
  %9311 = vmatmul.mubr.f32.gmra.mxu0 %v9181
  %v9312 = vpop.f32.mrf.mxu0
  %v9313 = vadd.f32 0.0, %v9312
  %v9314 = vpop.f32.mrf.mxu0
  %9315 = vmatprep.mubr.f32.mxu0 0.0
  %9316 = vmatmul.mubr.f32.gmra.mxu0 %v9184
  %v9317 = vpop.f32.mrf.mxu0
  %v9318 = vadd.f32 0.0, %v9317
  %v9319 = vpop.f32.mrf.mxu0
  %9320 = vmatprep.mubr.f32.mxu0 0.0
  %9321 = vmatmul.mubr.f32.gmra.mxu0 %v9187
  %v9322 = vpop.f32.mrf.mxu0
  %v9323 = vadd.f32 0.0, %v9322
  %v9324 = vpop.f32.mrf.mxu0
  %9325 = vmatprep.mubr.f32.mxu0 0.0
  %9326 = vmatmul.mubr.f32.gmra.mxu0 %v9190
  %v9327 = vpop.f32.mrf.mxu0
  %v9328 = vadd.f32 0.0, %v9327
  %v9329 = vpop.f32.mrf.mxu0
  %9330 = vmatprep.mubr.f32.mxu0 0.0
  %9331 = vmatmul.mubr.f32.gmra.mxu0 %v9193
  %v9332 = vpop.f32.mrf.mxu0
  %v9333 = vadd.f32 0.0, %v9332
  %v9334 = vpop.f32.mrf.mxu0
  %9335 = vmatprep.mubr.f32.mxu0 0.0
  %9336 = vmatmul.mubr.f32.gmra.mxu0 %v9196
  %v9337 = vpop.f32.mrf.mxu0
  %v9338 = vadd.f32 0.0, %v9337
  %v9339 = vpop.f32.mrf.mxu0
  %9340 = vmatprep.mubr.f32.mxu0 0.0
  %9341 = vmatmul.mubr.f32.gmra.mxu0 %v9199
  %v9342 = vpop.f32.mrf.mxu0
  %v9343 = vadd.f32 0.0, %v9342
  %v9344 = vpop.f32.mrf.mxu0
  %9345 = vdwg.mxu0
  %v9346 = vadd.f32 %v8989, %v9268
  %v9347 = vadd.f32 %v8990, %v9273
  %v9348 = vadd.f32 %v8991, %v9278
  %v9349 = vadd.f32 %v8992, %v9283
  %v9350 = vadd.f32 %v8993, %v9288
  %v9351 = vadd.f32 %v8994, %v9293
  %v9352 = vadd.f32 %v8995, %v9298
  %v9353 = vadd.f32 %v8996, %v9303
  %v9354 = vadd.f32 %v8997, %v9308
  %v9355 = vadd.f32 %v8998, %v9313
  %v9356 = vadd.f32 %v8999, %v9318
  %v9357 = vadd.f32 %v9000, %v9323
  %v9358 = vadd.f32 %v9001, %v9328
  %v9359 = vadd.f32 %v9002, %v9333
  %v9360 = vadd.f32 %v9003, %v9338
  %v9361 = vadd.f32 %v9004, %v9343
  %9362 = vmatprep.subr.mxu0 0.0
  %9363 = vmatpush1.msra.mxu0 %v6643
  %9364 = vmatprep.subr.mxu0 0.0
  %9365 = vmatpush1.msra.mxu0 %v6642
  %9366 = vmatprep.subr.mxu0 0.0
  %9367 = vmatpush1.msra.mxu0 %v6641
  %9368 = vmatprep.subr.mxu0 0.0
  %9369 = vmatpush1.msra.mxu0 %v6640
  %9370 = vmatprep.subr.mxu0 0.0
  %9371 = vmatpush1.msra.mxu0 %v6639
  %9372 = vmatprep.subr.mxu0 0.0
  %9373 = vmatpush1.msra.mxu0 %v6638
  %9374 = vmatprep.subr.mxu0 0.0
  %9375 = vmatpush1.msra.mxu0 %v6637
  %9376 = vmatprep.subr.mxu0 0.0
  %9377 = vmatpush1.msra.mxu0 %v6636
  %9378 = vmatprep.subr.mxu0 0.0
  %9379 = vmatpush1.msra.mxu0 %v6635
  %9380 = vmatprep.subr.mxu0 0.0
  %9381 = vmatpush1.msra.mxu0 %v6634
  %9382 = vmatprep.subr.mxu0 0.0
  %9383 = vmatpush1.msra.mxu0 %v6633
  %9384 = vmatprep.subr.mxu0 0.0
  %9385 = vmatpush1.msra.mxu0 %v6632
  %9386 = vmatprep.subr.mxu0 0.0
  %9387 = vmatpush1.msra.mxu0 %v6631
  %9388 = vmatprep.subr.mxu0 0.0
  %9389 = vmatpush1.msra.mxu0 %v6630
  %9390 = vmatprep.subr.mxu0 0.0
  %9391 = vmatpush1.msra.mxu0 %v6629
  %9392 = vmatprep.subr.mxu0 0.0
  %9393 = vmatpush1.msra.mxu0 %v6628
  %9394 = vmatprep.subr.mxu0 0.0
  %9395 = vmatpush2.msra.mxu0 0.0
  %9396 = vmatprep.subr.mxu0 0.0
  %9397 = vmatpush2.msra.mxu0 0.0
  %9398 = vmatprep.subr.mxu0 0.0
  %9399 = vmatpush2.msra.mxu0 0.0
  %9400 = vmatprep.subr.mxu0 0.0
  %9401 = vmatpush2.msra.mxu0 0.0
  %9402 = vmatprep.subr.mxu0 0.0
  %9403 = vmatpush2.msra.mxu0 0.0
  %9404 = vmatprep.subr.mxu0 0.0
  %9405 = vmatpush2.msra.mxu0 0.0
  %9406 = vmatprep.subr.mxu0 0.0
  %9407 = vmatpush2.msra.mxu0 0.0
  %9408 = vmatprep.subr.mxu0 0.0
  %9409 = vmatpush2.msra.mxu0 0.0
  %9410 = vmatprep.subr.mxu0 0.0
  %9411 = vmatpush2.msra.mxu0 0.0
  %9412 = vmatprep.subr.mxu0 0.0
  %9413 = vmatpush2.msra.mxu0 0.0
  %9414 = vmatprep.subr.mxu0 0.0
  %9415 = vmatpush2.msra.mxu0 0.0
  %9416 = vmatprep.subr.mxu0 0.0
  %9417 = vmatpush2.msra.mxu0 0.0
  %9418 = vmatprep.subr.mxu0 0.0
  %9419 = vmatpush2.msra.mxu0 0.0
  %9420 = vmatprep.subr.mxu0 0.0
  %9421 = vmatpush2.msra.mxu0 0.0
  %9422 = vmatprep.subr.mxu0 0.0
  %9423 = vmatpush2.msra.mxu0 0.0
  %9424 = vmatprep.subr.mxu0 0.0
  %9425 = vmatpush2.msra.mxu0 0.0
  %9426 = vmatprep.mubr.f32.mxu0 0.0
  %9427 = vmatmul.mubr.f32.gmra.mxu0 %v3145
  %v9428 = vpop.f32.mrf.mxu0
  %v9429 = vadd.f32 0.0, %v9428
  %v9430 = vpop.f32.mrf.mxu0
  %9431 = vmatprep.mubr.f32.mxu0 0.0
  %9432 = vmatmul.mubr.f32.gmra.mxu0 %v3146
  %v9433 = vpop.f32.mrf.mxu0
  %v9434 = vadd.f32 0.0, %v9433
  %v9435 = vpop.f32.mrf.mxu0
  %9436 = vmatprep.mubr.f32.mxu0 0.0
  %9437 = vmatmul.mubr.f32.gmra.mxu0 %v3147
  %v9438 = vpop.f32.mrf.mxu0
  %v9439 = vadd.f32 0.0, %v9438
  %v9440 = vpop.f32.mrf.mxu0
  %9441 = vmatprep.mubr.f32.mxu0 0.0
  %9442 = vmatmul.mubr.f32.gmra.mxu0 %v3148
  %v9443 = vpop.f32.mrf.mxu0
  %v9444 = vadd.f32 0.0, %v9443
  %v9445 = vpop.f32.mrf.mxu0
  %9446 = vmatprep.mubr.f32.mxu0 0.0
  %9447 = vmatmul.mubr.f32.gmra.mxu0 %v3149
  %v9448 = vpop.f32.mrf.mxu0
  %v9449 = vadd.f32 0.0, %v9448
  %v9450 = vpop.f32.mrf.mxu0
  %9451 = vmatprep.mubr.f32.mxu0 0.0
  %9452 = vmatmul.mubr.f32.gmra.mxu0 %v3150
  %v9453 = vpop.f32.mrf.mxu0
  %v9454 = vadd.f32 0.0, %v9453
  %v9455 = vpop.f32.mrf.mxu0
  %9456 = vmatprep.mubr.f32.mxu0 0.0
  %9457 = vmatmul.mubr.f32.gmra.mxu0 %v3151
  %v9458 = vpop.f32.mrf.mxu0
  %v9459 = vadd.f32 0.0, %v9458
  %v9460 = vpop.f32.mrf.mxu0
  %9461 = vmatprep.mubr.f32.mxu0 0.0
  %9462 = vmatmul.mubr.f32.gmra.mxu0 %v3152
  %v9463 = vpop.f32.mrf.mxu0
  %v9464 = vadd.f32 0.0, %v9463
  %v9465 = vpop.f32.mrf.mxu0
  %9466 = vmatprep.mubr.f32.mxu0 0.0
  %9467 = vmatmul.mubr.f32.gmra.mxu0 %v3153
  %v9468 = vpop.f32.mrf.mxu0
  %v9469 = vadd.f32 0.0, %v9468
  %v9470 = vpop.f32.mrf.mxu0
  %9471 = vmatprep.mubr.f32.mxu0 0.0
  %9472 = vmatmul.mubr.f32.gmra.mxu0 %v3154
  %v9473 = vpop.f32.mrf.mxu0
  %v9474 = vadd.f32 0.0, %v9473
  %v9475 = vpop.f32.mrf.mxu0
  %9476 = vmatprep.mubr.f32.mxu0 0.0
  %9477 = vmatmul.mubr.f32.gmra.mxu0 %v3155
  %v9478 = vpop.f32.mrf.mxu0
  %v9479 = vadd.f32 0.0, %v9478
  %v9480 = vpop.f32.mrf.mxu0
  %9481 = vmatprep.mubr.f32.mxu0 0.0
  %9482 = vmatmul.mubr.f32.gmra.mxu0 %v3156
  %v9483 = vpop.f32.mrf.mxu0
  %v9484 = vadd.f32 0.0, %v9483
  %v9485 = vpop.f32.mrf.mxu0
  %9486 = vmatprep.mubr.f32.mxu0 0.0
  %9487 = vmatmul.mubr.f32.gmra.mxu0 %v3157
  %v9488 = vpop.f32.mrf.mxu0
  %v9489 = vadd.f32 0.0, %v9488
  %v9490 = vpop.f32.mrf.mxu0
  %9491 = vmatprep.mubr.f32.mxu0 0.0
  %9492 = vmatmul.mubr.f32.gmra.mxu0 %v3158
  %v9493 = vpop.f32.mrf.mxu0
  %v9494 = vadd.f32 0.0, %v9493
  %v9495 = vpop.f32.mrf.mxu0
  %9496 = vmatprep.mubr.f32.mxu0 0.0
  %9497 = vmatmul.mubr.f32.gmra.mxu0 %v3159
  %v9498 = vpop.f32.mrf.mxu0
  %v9499 = vadd.f32 0.0, %v9498
  %v9500 = vpop.f32.mrf.mxu0
  %9501 = vmatprep.mubr.f32.mxu0 0.0
  %9502 = vmatmul.mubr.f32.gmra.mxu0 %v3160
  %v9503 = vpop.f32.mrf.mxu0
  %v9504 = vadd.f32 0.0, %v9503
  %v9505 = vpop.f32.mrf.mxu0
  %9506 = vdwg.mxu0
  %s9507 = scalar_lea.vmem %s8, 128
  %v9508 = vld [vmem:[%s9507] sm:$0xff]
  %v9509 = vld [vmem:[%s9507 + $0x8] sm:$0xff]
  %v9511 = vsel %vm6792, %v9429, 0
  %v9514 = vsel %vm6792, %v9434, 0
  %v9517 = vsel %vm6792, %v9439, 0
  %v9520 = vsel %vm6792, %v9444, 0
  %v9523 = vsel %vm6792, %v9449, 0
  %v9526 = vsel %vm6792, %v9454, 0
  %v9529 = vsel %vm6792, %v9459, 0
  %v9532 = vsel %vm6792, %v9464, 0
  %v9535 = vsel %vm6792, %v9469, 0
  %v9538 = vsel %vm6792, %v9474, 0
  %v9541 = vsel %vm6792, %v9479, 0
  %v9544 = vsel %vm6792, %v9484, 0
  %v9547 = vsel %vm6792, %v9489, 0
  %v9550 = vsel %vm6792, %v9494, 0
  %v9553 = vsel %vm6792, %v9499, 0
  %v9556 = vsel %vm6792, %v9504, 0
  %9558 = vmatprep.subr.mxu0 0.0
  %9559 = vmatpush1.msra.mxu0 0.0
  %9560 = vmatprep.subr.mxu0 0.0
  %9561 = vmatpush1.msra.mxu0 0.0
  %9562 = vmatprep.subr.mxu0 0.0
  %9563 = vmatpush1.msra.mxu0 0.0
  %9564 = vmatprep.subr.mxu0 0.0
  %9565 = vmatpush1.msra.mxu0 0.0
  %9566 = vmatprep.subr.mxu0 0.0
  %9567 = vmatpush1.msra.mxu0 0.0
  %9568 = vmatprep.subr.mxu0 0.0
  %9569 = vmatpush1.msra.mxu0 0.0
  %9570 = vmatprep.subr.mxu0 0.0
  %9571 = vmatpush1.msra.mxu0 0.0
  %9572 = vmatprep.subr.mxu0 0.0
  %9573 = vmatpush1.msra.mxu0 0.0
  %9574 = vmatprep.subr.mxu0 0.0
  %9575 = vmatpush1.msra.mxu0 0.0
  %9576 = vmatprep.subr.mxu0 0.0
  %9577 = vmatpush1.msra.mxu0 0.0
  %9578 = vmatprep.subr.mxu0 0.0
  %9579 = vmatpush1.msra.mxu0 0.0
  %9580 = vmatprep.subr.mxu0 0.0
  %9581 = vmatpush1.msra.mxu0 0.0
  %9582 = vmatprep.subr.mxu0 0.0
  %9583 = vmatpush1.msra.mxu0 0.0
  %9584 = vmatprep.subr.mxu0 0.0
  %9585 = vmatpush1.msra.mxu0 0.0
  %9586 = vmatprep.subr.mxu0 0.0
  %9587 = vmatpush1.msra.mxu0 %v9509
  %9588 = vmatprep.subr.mxu0 0.0
  %9589 = vmatpush1.msra.mxu0 %v9508
  %9590 = vmatprep.subr.mxu0 0.0
  %9591 = vmatpush2.msra.mxu0 0.0
  %9592 = vmatprep.subr.mxu0 0.0
  %9593 = vmatpush2.msra.mxu0 0.0
  %9594 = vmatprep.subr.mxu0 0.0
  %9595 = vmatpush2.msra.mxu0 0.0
  %9596 = vmatprep.subr.mxu0 0.0
  %9597 = vmatpush2.msra.mxu0 0.0
  %9598 = vmatprep.subr.mxu0 0.0
  %9599 = vmatpush2.msra.mxu0 0.0
  %9600 = vmatprep.subr.mxu0 0.0
  %9601 = vmatpush2.msra.mxu0 0.0
  %9602 = vmatprep.subr.mxu0 0.0
  %9603 = vmatpush2.msra.mxu0 0.0
  %9604 = vmatprep.subr.mxu0 0.0
  %9605 = vmatpush2.msra.mxu0 0.0
  %9606 = vmatprep.subr.mxu0 0.0
  %9607 = vmatpush2.msra.mxu0 0.0
  %9608 = vmatprep.subr.mxu0 0.0
  %9609 = vmatpush2.msra.mxu0 0.0
  %9610 = vmatprep.subr.mxu0 0.0
  %9611 = vmatpush2.msra.mxu0 0.0
  %9612 = vmatprep.subr.mxu0 0.0
  %9613 = vmatpush2.msra.mxu0 0.0
  %9614 = vmatprep.subr.mxu0 0.0
  %9615 = vmatpush2.msra.mxu0 0.0
  %9616 = vmatprep.subr.mxu0 0.0
  %9617 = vmatpush2.msra.mxu0 0.0
  %9618 = vmatprep.subr.mxu0 0.0
  %9619 = vmatpush2.msra.mxu0 0.0
  %9620 = vmatprep.subr.mxu0 0.0
  %9621 = vmatpush2.msra.mxu0 0.0
  %9622 = vmatprep.mubr.f32.mxu0 0.0
  %9623 = vmatmul.mubr.f32.gmra.mxu0 %v9511
  %v9624 = vpop.f32.mrf.mxu0
  %v9625 = vadd.f32 0.0, %v9624
  %v9626 = vpop.f32.mrf.mxu0
  %9627 = vmatprep.mubr.f32.mxu0 0.0
  %9628 = vmatmul.mubr.f32.gmra.mxu0 %v9514
  %v9629 = vpop.f32.mrf.mxu0
  %v9630 = vadd.f32 0.0, %v9629
  %v9631 = vpop.f32.mrf.mxu0
  %9632 = vmatprep.mubr.f32.mxu0 0.0
  %9633 = vmatmul.mubr.f32.gmra.mxu0 %v9517
  %v9634 = vpop.f32.mrf.mxu0
  %v9635 = vadd.f32 0.0, %v9634
  %v9636 = vpop.f32.mrf.mxu0
  %9637 = vmatprep.mubr.f32.mxu0 0.0
  %9638 = vmatmul.mubr.f32.gmra.mxu0 %v9520
  %v9639 = vpop.f32.mrf.mxu0
  %v9640 = vadd.f32 0.0, %v9639
  %v9641 = vpop.f32.mrf.mxu0
  %9642 = vmatprep.mubr.f32.mxu0 0.0
  %9643 = vmatmul.mubr.f32.gmra.mxu0 %v9523
  %v9644 = vpop.f32.mrf.mxu0
  %v9645 = vadd.f32 0.0, %v9644
  %v9646 = vpop.f32.mrf.mxu0
  %9647 = vmatprep.mubr.f32.mxu0 0.0
  %9648 = vmatmul.mubr.f32.gmra.mxu0 %v9526
  %v9649 = vpop.f32.mrf.mxu0
  %v9650 = vadd.f32 0.0, %v9649
  %v9651 = vpop.f32.mrf.mxu0
  %9652 = vmatprep.mubr.f32.mxu0 0.0
  %9653 = vmatmul.mubr.f32.gmra.mxu0 %v9529
  %v9654 = vpop.f32.mrf.mxu0
  %v9655 = vadd.f32 0.0, %v9654
  %v9656 = vpop.f32.mrf.mxu0
  %9657 = vmatprep.mubr.f32.mxu0 0.0
  %9658 = vmatmul.mubr.f32.gmra.mxu0 %v9532
  %v9659 = vpop.f32.mrf.mxu0
  %v9660 = vadd.f32 0.0, %v9659
  %v9661 = vpop.f32.mrf.mxu0
  %9662 = vmatprep.mubr.f32.mxu0 0.0
  %9663 = vmatmul.mubr.f32.gmra.mxu0 %v9535
  %v9664 = vpop.f32.mrf.mxu0
  %v9665 = vadd.f32 0.0, %v9664
  %v9666 = vpop.f32.mrf.mxu0
  %9667 = vmatprep.mubr.f32.mxu0 0.0
  %9668 = vmatmul.mubr.f32.gmra.mxu0 %v9538
  %v9669 = vpop.f32.mrf.mxu0
  %v9670 = vadd.f32 0.0, %v9669
  %v9671 = vpop.f32.mrf.mxu0
  %9672 = vmatprep.mubr.f32.mxu0 0.0
  %9673 = vmatmul.mubr.f32.gmra.mxu0 %v9541
  %v9674 = vpop.f32.mrf.mxu0
  %v9675 = vadd.f32 0.0, %v9674
  %v9676 = vpop.f32.mrf.mxu0
  %9677 = vmatprep.mubr.f32.mxu0 0.0
  %9678 = vmatmul.mubr.f32.gmra.mxu0 %v9544
  %v9679 = vpop.f32.mrf.mxu0
  %v9680 = vadd.f32 0.0, %v9679
  %v9681 = vpop.f32.mrf.mxu0
  %9682 = vmatprep.mubr.f32.mxu0 0.0
  %9683 = vmatmul.mubr.f32.gmra.mxu0 %v9547
  %v9684 = vpop.f32.mrf.mxu0
  %v9685 = vadd.f32 0.0, %v9684
  %v9686 = vpop.f32.mrf.mxu0
  %9687 = vmatprep.mubr.f32.mxu0 0.0
  %9688 = vmatmul.mubr.f32.gmra.mxu0 %v9550
  %v9689 = vpop.f32.mrf.mxu0
  %v9690 = vadd.f32 0.0, %v9689
  %v9691 = vpop.f32.mrf.mxu0
  %9692 = vmatprep.mubr.f32.mxu0 0.0
  %9693 = vmatmul.mubr.f32.gmra.mxu0 %v9553
  %v9694 = vpop.f32.mrf.mxu0
  %v9695 = vadd.f32 0.0, %v9694
  %v9696 = vpop.f32.mrf.mxu0
  %9697 = vmatprep.mubr.f32.mxu0 0.0
  %9698 = vmatmul.mubr.f32.gmra.mxu0 %v9556
  %v9699 = vpop.f32.mrf.mxu0
  %v9700 = vadd.f32 0.0, %v9699
  %v9701 = vpop.f32.mrf.mxu0
  %9702 = vdwg.mxu0
  %v9703 = vadd.f32 %v9346, %v9625
  %v9704 = vadd.f32 %v9347, %v9630
  %v9705 = vadd.f32 %v9348, %v9635
  %v9706 = vadd.f32 %v9349, %v9640
  %v9707 = vadd.f32 %v9350, %v9645
  %v9708 = vadd.f32 %v9351, %v9650
  %v9709 = vadd.f32 %v9352, %v9655
  %v9710 = vadd.f32 %v9353, %v9660
  %v9711 = vadd.f32 %v9354, %v9665
  %v9712 = vadd.f32 %v9355, %v9670
  %v9713 = vadd.f32 %v9356, %v9675
  %v9714 = vadd.f32 %v9357, %v9680
  %v9715 = vadd.f32 %v9358, %v9685
  %v9716 = vadd.f32 %v9359, %v9690
  %v9717 = vadd.f32 %v9360, %v9695
  %v9718 = vadd.f32 %v9361, %v9700
  %v9719 = vmax.f32 %v9703, 0.0
  %v9720 = vmax.f32 %v9704, 0.0
  %v9721 = vmax.f32 %v9705, 0.0
  %v9722 = vmax.f32 %v9706, 0.0
  %v9723 = vmax.f32 %v9707, 0.0
  %v9724 = vmax.f32 %v9708, 0.0
  %v9725 = vmax.f32 %v9709, 0.0
  %v9726 = vmax.f32 %v9710, 0.0
  %v9727 = vmax.f32 %v9711, 0.0
  %v9728 = vmax.f32 %v9712, 0.0
  %v9729 = vmax.f32 %v9713, 0.0
  %v9730 = vmax.f32 %v9714, 0.0
  %v9731 = vmax.f32 %v9715, 0.0
  %v9732 = vmax.f32 %v9716, 0.0
  %v9733 = vmax.f32 %v9717, 0.0
  %v9734 = vmax.f32 %v9718, 0.0
  %v9735 = vld [vmem:[%s10] sm:$0xff]
  %v9736 = vld [vmem:[%s11] sm:$0x1]
  %v9738 = vlaneseq
  %v9739 = vshrl.u32 %v9738, 7
  %v9740 = vsub.s32 0, %v9739
  %v9741 = vrot.slane %v9736, %v9740
  %vm9743 = vcmask 64512
  %v9745 = vsel %vm9743, %v9719, 0
  %v9748 = vsel %vm9743, %v9720, 0
  %v9751 = vsel %vm9743, %v9721, 0
  %v9754 = vsel %vm9743, %v9722, 0
  %v9757 = vsel %vm9743, %v9723, 0
  %v9760 = vsel %vm9743, %v9724, 0
  %v9763 = vsel %vm9743, %v9725, 0
  %v9766 = vsel %vm9743, %v9726, 0
  %v9769 = vsel %vm9743, %v9727, 0
  %v9772 = vsel %vm9743, %v9728, 0
  %v9775 = vsel %vm9743, %v9729, 0
  %v9778 = vsel %vm9743, %v9730, 0
  %v9781 = vsel %vm9743, %v9731, 0
  %v9784 = vsel %vm9743, %v9732, 0
  %v9787 = vsel %vm9743, %v9733, 0
  %v9790 = vsel %vm9743, %v9734, 0
  %9792 = vmatprep.subr.mxu0 0.0
  %9793 = vmatpush1.msra.mxu0 0.0
  %9794 = vmatprep.subr.mxu0 0.0
  %9795 = vmatpush1.msra.mxu0 0.0
  %9796 = vmatprep.subr.mxu0 0.0
  %9797 = vmatpush1.msra.mxu0 0.0
  %9798 = vmatprep.subr.mxu0 0.0
  %9799 = vmatpush1.msra.mxu0 0.0
  %9800 = vmatprep.subr.mxu0 0.0
  %9801 = vmatpush1.msra.mxu0 0.0
  %9802 = vmatprep.subr.mxu0 0.0
  %9803 = vmatpush1.msra.mxu0 0.0
  %9804 = vmatprep.subr.mxu0 0.0
  %9805 = vmatpush1.msra.mxu0 0.0
  %9806 = vmatprep.subr.mxu0 0.0
  %9807 = vmatpush1.msra.mxu0 0.0
  %9808 = vmatprep.subr.mxu0 0.0
  %9809 = vmatpush1.msra.mxu0 0.0
  %9810 = vmatprep.subr.mxu0 0.0
  %9811 = vmatpush1.msra.mxu0 0.0
  %9812 = vmatprep.subr.mxu0 0.0
  %9813 = vmatpush1.msra.mxu0 0.0
  %9814 = vmatprep.subr.mxu0 0.0
  %9815 = vmatpush1.msra.mxu0 0.0
  %9816 = vmatprep.subr.mxu0 0.0
  %9817 = vmatpush1.msra.mxu0 0.0
  %9818 = vmatprep.subr.mxu0 0.0
  %9819 = vmatpush1.msra.mxu0 0.0
  %9820 = vmatprep.subr.mxu0 0.0
  %9821 = vmatpush1.msra.mxu0 0.0
  %9822 = vmatprep.subr.mxu0 0.0
  %9823 = vmatpush1.msra.mxu0 %v9735
  %9824 = vmatprep.subr.mxu0 0.0
  %9825 = vmatpush2.msra.mxu0 0.0
  %9826 = vmatprep.subr.mxu0 0.0
  %9827 = vmatpush2.msra.mxu0 0.0
  %9828 = vmatprep.subr.mxu0 0.0
  %9829 = vmatpush2.msra.mxu0 0.0
  %9830 = vmatprep.subr.mxu0 0.0
  %9831 = vmatpush2.msra.mxu0 0.0
  %9832 = vmatprep.subr.mxu0 0.0
  %9833 = vmatpush2.msra.mxu0 0.0
  %9834 = vmatprep.subr.mxu0 0.0
  %9835 = vmatpush2.msra.mxu0 0.0
  %9836 = vmatprep.subr.mxu0 0.0
  %9837 = vmatpush2.msra.mxu0 0.0
  %9838 = vmatprep.subr.mxu0 0.0
  %9839 = vmatpush2.msra.mxu0 0.0
  %9840 = vmatprep.subr.mxu0 0.0
  %9841 = vmatpush2.msra.mxu0 0.0
  %9842 = vmatprep.subr.mxu0 0.0
  %9843 = vmatpush2.msra.mxu0 0.0
  %9844 = vmatprep.subr.mxu0 0.0
  %9845 = vmatpush2.msra.mxu0 0.0
  %9846 = vmatprep.subr.mxu0 0.0
  %9847 = vmatpush2.msra.mxu0 0.0
  %9848 = vmatprep.subr.mxu0 0.0
  %9849 = vmatpush2.msra.mxu0 0.0
  %9850 = vmatprep.subr.mxu0 0.0
  %9851 = vmatpush2.msra.mxu0 0.0
  %9852 = vmatprep.subr.mxu0 0.0
  %9853 = vmatpush2.msra.mxu0 0.0
  %9854 = vmatprep.subr.mxu0 0.0
  %9855 = vmatpush2.msra.mxu0 0.0
  %9856 = vmatprep.mubr.f32.mxu0 0.0
  %9857 = vmatmul.mubr.f32.gmra.mxu0 %v9745
  %v9858 = vpop.f32.mrf.mxu0
  %v9859 = vadd.f32 %v9741, %v9858
  %v9860 = vpop.f32.mrf.mxu0
  %9861 = vmatprep.mubr.f32.mxu0 0.0
  %9862 = vmatmul.mubr.f32.gmra.mxu0 %v9748
  %v9863 = vpop.f32.mrf.mxu0
  %v9864 = vadd.f32 %v9741, %v9863
  %v9865 = vpop.f32.mrf.mxu0
  %9866 = vmatprep.mubr.f32.mxu0 0.0
  %9867 = vmatmul.mubr.f32.gmra.mxu0 %v9751
  %v9868 = vpop.f32.mrf.mxu0
  %v9869 = vadd.f32 %v9741, %v9868
  %v9870 = vpop.f32.mrf.mxu0
  %9871 = vmatprep.mubr.f32.mxu0 0.0
  %9872 = vmatmul.mubr.f32.gmra.mxu0 %v9754
  %v9873 = vpop.f32.mrf.mxu0
  %v9874 = vadd.f32 %v9741, %v9873
  %v9875 = vpop.f32.mrf.mxu0
  %9876 = vmatprep.mubr.f32.mxu0 0.0
  %9877 = vmatmul.mubr.f32.gmra.mxu0 %v9757
  %v9878 = vpop.f32.mrf.mxu0
  %v9879 = vadd.f32 %v9741, %v9878
  %v9880 = vpop.f32.mrf.mxu0
  %9881 = vmatprep.mubr.f32.mxu0 0.0
  %9882 = vmatmul.mubr.f32.gmra.mxu0 %v9760
  %v9883 = vpop.f32.mrf.mxu0
  %v9884 = vadd.f32 %v9741, %v9883
  %v9885 = vpop.f32.mrf.mxu0
  %9886 = vmatprep.mubr.f32.mxu0 0.0
  %9887 = vmatmul.mubr.f32.gmra.mxu0 %v9763
  %v9888 = vpop.f32.mrf.mxu0
  %v9889 = vadd.f32 %v9741, %v9888
  %v9890 = vpop.f32.mrf.mxu0
  %9891 = vmatprep.mubr.f32.mxu0 0.0
  %9892 = vmatmul.mubr.f32.gmra.mxu0 %v9766
  %v9893 = vpop.f32.mrf.mxu0
  %v9894 = vadd.f32 %v9741, %v9893
  %v9895 = vpop.f32.mrf.mxu0
  %9896 = vmatprep.mubr.f32.mxu0 0.0
  %9897 = vmatmul.mubr.f32.gmra.mxu0 %v9769
  %v9898 = vpop.f32.mrf.mxu0
  %v9899 = vadd.f32 %v9741, %v9898
  %v9900 = vpop.f32.mrf.mxu0
  %9901 = vmatprep.mubr.f32.mxu0 0.0
  %9902 = vmatmul.mubr.f32.gmra.mxu0 %v9772
  %v9903 = vpop.f32.mrf.mxu0
  %v9904 = vadd.f32 %v9741, %v9903
  %v9905 = vpop.f32.mrf.mxu0
  %9906 = vmatprep.mubr.f32.mxu0 0.0
  %9907 = vmatmul.mubr.f32.gmra.mxu0 %v9775
  %v9908 = vpop.f32.mrf.mxu0
  %v9909 = vadd.f32 %v9741, %v9908
  %v9910 = vpop.f32.mrf.mxu0
  %9911 = vmatprep.mubr.f32.mxu0 0.0
  %9912 = vmatmul.mubr.f32.gmra.mxu0 %v9778
  %v9913 = vpop.f32.mrf.mxu0
  %v9914 = vadd.f32 %v9741, %v9913
  %v9915 = vpop.f32.mrf.mxu0
  %9916 = vmatprep.mubr.f32.mxu0 0.0
  %9917 = vmatmul.mubr.f32.gmra.mxu0 %v9781
  %v9918 = vpop.f32.mrf.mxu0
  %v9919 = vadd.f32 %v9741, %v9918
  %v9920 = vpop.f32.mrf.mxu0
  %9921 = vmatprep.mubr.f32.mxu0 0.0
  %9922 = vmatmul.mubr.f32.gmra.mxu0 %v9784
  %v9923 = vpop.f32.mrf.mxu0
  %v9924 = vadd.f32 %v9741, %v9923
  %v9925 = vpop.f32.mrf.mxu0
  %9926 = vmatprep.mubr.f32.mxu0 0.0
  %9927 = vmatmul.mubr.f32.gmra.mxu0 %v9787
  %v9928 = vpop.f32.mrf.mxu0
  %v9929 = vadd.f32 %v9741, %v9928
  %v9930 = vpop.f32.mrf.mxu0
  %9931 = vmatprep.mubr.f32.mxu0 0.0
  %9932 = vmatmul.mubr.f32.gmra.mxu0 %v9790
  %v9933 = vpop.f32.mrf.mxu0
  %v9934 = vadd.f32 %v9741, %v9933
  %v9935 = vpop.f32.mrf.mxu0
  %9936 = vdwg.mxu0
  %v9937 = vmul.f32 %v3520, %v9859
  %v9938 = vmul.f32 %v3521, %v9864
  %v9939 = vmul.f32 %v3522, %v9869
  %v9940 = vmul.f32 %v3523, %v9874
  %v9941 = vmul.f32 %v3524, %v9879
  %v9942 = vmul.f32 %v3525, %v9884
  %v9943 = vmul.f32 %v3526, %v9889
  %v9944 = vmul.f32 %v3527, %v9894
  %v9945 = vmul.f32 %v3528, %v9899
  %v9946 = vmul.f32 %v3529, %v9904
  %v9947 = vmul.f32 %v3530, %v9909
  %v9948 = vmul.f32 %v3531, %v9914
  %v9949 = vmul.f32 %v3532, %v9919
  %v9950 = vmul.f32 %v3533, %v9924
  %v9951 = vmul.f32 %v3534, %v9929
  %v9952 = vmul.f32 %v3535, %v9934
  %v9953 = vld [vmem:[%s12] sm:$0xff]
  %v9954 = vld [vmem:[%s1] sm:$0xff]
  %v9955 = vld [vmem:[%s1 + $0x8] sm:$0xff]
  %v9956 = vld [vmem:[%s1 + $0x10] sm:$0xff]
  %v9957 = vld [vmem:[%s1 + $0x18] sm:$0xff]
  %v9958 = vld [vmem:[%s1 + $0x20] sm:$0xff]
  %v9959 = vld [vmem:[%s1 + $0x28] sm:$0xff]
  %v9960 = vld [vmem:[%s1 + $0x30] sm:$0xff]
  %v9961 = vld [vmem:[%s1 + $0x38] sm:$0xff]
  %v9962 = vld [vmem:[%s1 + $0x40] sm:$0xff]
  %v9963 = vld [vmem:[%s1 + $0x48] sm:$0xff]
  %v9964 = vld [vmem:[%s1 + $0x50] sm:$0xff]
  %v9965 = vld [vmem:[%s1 + $0x58] sm:$0xff]
  %v9966 = vld [vmem:[%s1 + $0x60] sm:$0xff]
  %v9967 = vld [vmem:[%s1 + $0x68] sm:$0xff]
  %v9968 = vld [vmem:[%s1 + $0x70] sm:$0xff]
  %v9969 = vld [vmem:[%s1 + $0x78] sm:$0xff]
  %9970 = vmatprep.subr.mxu0 0.0
  %9971 = vmatpush1.msra.mxu0 %v9952
  %9972 = vmatprep.subr.mxu0 0.0
  %9973 = vmatpush1.msra.mxu0 %v9951
  %9974 = vmatprep.subr.mxu0 0.0
  %9975 = vmatpush1.msra.mxu0 %v9950
  %9976 = vmatprep.subr.mxu0 0.0
  %9977 = vmatpush1.msra.mxu0 %v9949
  %9978 = vmatprep.subr.mxu0 0.0
  %9979 = vmatpush1.msra.mxu0 %v9948
  %9980 = vmatprep.subr.mxu0 0.0
  %9981 = vmatpush1.msra.mxu0 %v9947
  %9982 = vmatprep.subr.mxu0 0.0
  %9983 = vmatpush1.msra.mxu0 %v9946
  %9984 = vmatprep.subr.mxu0 0.0
  %9985 = vmatpush1.msra.mxu0 %v9945
  %9986 = vmatprep.subr.mxu0 0.0
  %9987 = vmatpush1.msra.mxu0 %v9944
  %9988 = vmatprep.subr.mxu0 0.0
  %9989 = vmatpush1.msra.mxu0 %v9943
  %9990 = vmatprep.subr.mxu0 0.0
  %9991 = vmatpush1.msra.mxu0 %v9942
  %9992 = vmatprep.subr.mxu0 0.0
  %9993 = vmatpush1.msra.mxu0 %v9941
  %9994 = vmatprep.subr.mxu0 0.0
  %9995 = vmatpush1.msra.mxu0 %v9940
  %9996 = vmatprep.subr.mxu0 0.0
  %9997 = vmatpush1.msra.mxu0 %v9939
  %9998 = vmatprep.subr.mxu0 0.0
  %9999 = vmatpush1.msra.mxu0 %v9938
  %10000 = vmatprep.subr.mxu0 0.0
  %10001 = vmatpush1.msra.mxu0 %v9937
  %10002 = vmatprep.subr.mxu0 0.0
  %10003 = vmatpush2.msra.mxu0 0.0
  %10004 = vmatprep.subr.mxu0 0.0
  %10005 = vmatpush2.msra.mxu0 0.0
  %10006 = vmatprep.subr.mxu0 0.0
  %10007 = vmatpush2.msra.mxu0 0.0
  %10008 = vmatprep.subr.mxu0 0.0
  %10009 = vmatpush2.msra.mxu0 0.0
  %10010 = vmatprep.subr.mxu0 0.0
  %10011 = vmatpush2.msra.mxu0 0.0
  %10012 = vmatprep.subr.mxu0 0.0
  %10013 = vmatpush2.msra.mxu0 0.0
  %10014 = vmatprep.subr.mxu0 0.0
  %10015 = vmatpush2.msra.mxu0 0.0
  %10016 = vmatprep.subr.mxu0 0.0
  %10017 = vmatpush2.msra.mxu0 0.0
  %10018 = vmatprep.subr.mxu0 0.0
  %10019 = vmatpush2.msra.mxu0 0.0
  %10020 = vmatprep.subr.mxu0 0.0
  %10021 = vmatpush2.msra.mxu0 0.0
  %10022 = vmatprep.subr.mxu0 0.0
  %10023 = vmatpush2.msra.mxu0 0.0
  %10024 = vmatprep.subr.mxu0 0.0
  %10025 = vmatpush2.msra.mxu0 0.0
  %10026 = vmatprep.subr.mxu0 0.0
  %10027 = vmatpush2.msra.mxu0 0.0
  %10028 = vmatprep.subr.mxu0 0.0
  %10029 = vmatpush2.msra.mxu0 0.0
  %10030 = vmatprep.subr.mxu0 0.0
  %10031 = vmatpush2.msra.mxu0 0.0
  %10032 = vmatprep.subr.mxu0 0.0
  %10033 = vmatpush2.msra.mxu0 0.0
  %10034 = vmatprep.mubr.f32.mxu0 0.0
  %10035 = vmatmul.mubr.f32.gmra.mxu0 %v9954
  %v10036 = vpop.f32.mrf.mxu0
  %v10037 = vadd.f32 0.0, %v10036
  %v10038 = vpop.f32.mrf.mxu0
  %10039 = vmatprep.mubr.f32.mxu0 0.0
  %10040 = vmatmul.mubr.f32.gmra.mxu0 %v9955
  %v10041 = vpop.f32.mrf.mxu0
  %v10042 = vadd.f32 0.0, %v10041
  %v10043 = vpop.f32.mrf.mxu0
  %10044 = vmatprep.mubr.f32.mxu0 0.0
  %10045 = vmatmul.mubr.f32.gmra.mxu0 %v9956
  %v10046 = vpop.f32.mrf.mxu0
  %v10047 = vadd.f32 0.0, %v10046
  %v10048 = vpop.f32.mrf.mxu0
  %10049 = vmatprep.mubr.f32.mxu0 0.0
  %10050 = vmatmul.mubr.f32.gmra.mxu0 %v9957
  %v10051 = vpop.f32.mrf.mxu0
  %v10052 = vadd.f32 0.0, %v10051
  %v10053 = vpop.f32.mrf.mxu0
  %10054 = vmatprep.mubr.f32.mxu0 0.0
  %10055 = vmatmul.mubr.f32.gmra.mxu0 %v9958
  %v10056 = vpop.f32.mrf.mxu0
  %v10057 = vadd.f32 0.0, %v10056
  %v10058 = vpop.f32.mrf.mxu0
  %10059 = vmatprep.mubr.f32.mxu0 0.0
  %10060 = vmatmul.mubr.f32.gmra.mxu0 %v9959
  %v10061 = vpop.f32.mrf.mxu0
  %v10062 = vadd.f32 0.0, %v10061
  %v10063 = vpop.f32.mrf.mxu0
  %10064 = vmatprep.mubr.f32.mxu0 0.0
  %10065 = vmatmul.mubr.f32.gmra.mxu0 %v9960
  %v10066 = vpop.f32.mrf.mxu0
  %v10067 = vadd.f32 0.0, %v10066
  %v10068 = vpop.f32.mrf.mxu0
  %10069 = vmatprep.mubr.f32.mxu0 0.0
  %10070 = vmatmul.mubr.f32.gmra.mxu0 %v9961
  %v10071 = vpop.f32.mrf.mxu0
  %v10072 = vadd.f32 0.0, %v10071
  %v10073 = vpop.f32.mrf.mxu0
  %10074 = vmatprep.mubr.f32.mxu0 0.0
  %10075 = vmatmul.mubr.f32.gmra.mxu0 %v9962
  %v10076 = vpop.f32.mrf.mxu0
  %v10077 = vadd.f32 0.0, %v10076
  %v10078 = vpop.f32.mrf.mxu0
  %10079 = vmatprep.mubr.f32.mxu0 0.0
  %10080 = vmatmul.mubr.f32.gmra.mxu0 %v9963
  %v10081 = vpop.f32.mrf.mxu0
  %v10082 = vadd.f32 0.0, %v10081
  %v10083 = vpop.f32.mrf.mxu0
  %10084 = vmatprep.mubr.f32.mxu0 0.0
  %10085 = vmatmul.mubr.f32.gmra.mxu0 %v9964
  %v10086 = vpop.f32.mrf.mxu0
  %v10087 = vadd.f32 0.0, %v10086
  %v10088 = vpop.f32.mrf.mxu0
  %10089 = vmatprep.mubr.f32.mxu0 0.0
  %10090 = vmatmul.mubr.f32.gmra.mxu0 %v9965
  %v10091 = vpop.f32.mrf.mxu0
  %v10092 = vadd.f32 0.0, %v10091
  %v10093 = vpop.f32.mrf.mxu0
  %10094 = vmatprep.mubr.f32.mxu0 0.0
  %10095 = vmatmul.mubr.f32.gmra.mxu0 %v9966
  %v10096 = vpop.f32.mrf.mxu0
  %v10097 = vadd.f32 0.0, %v10096
  %v10098 = vpop.f32.mrf.mxu0
  %10099 = vmatprep.mubr.f32.mxu0 0.0
  %10100 = vmatmul.mubr.f32.gmra.mxu0 %v9967
  %v10101 = vpop.f32.mrf.mxu0
  %v10102 = vadd.f32 0.0, %v10101
  %v10103 = vpop.f32.mrf.mxu0
  %10104 = vmatprep.mubr.f32.mxu0 0.0
  %10105 = vmatmul.mubr.f32.gmra.mxu0 %v9968
  %v10106 = vpop.f32.mrf.mxu0
  %v10107 = vadd.f32 0.0, %v10106
  %v10108 = vpop.f32.mrf.mxu0
  %10109 = vmatprep.mubr.f32.mxu0 0.0
  %10110 = vmatmul.mubr.f32.gmra.mxu0 %v9969
  %v10111 = vpop.f32.mrf.mxu0
  %v10112 = vadd.f32 0.0, %v10111
  %v10113 = vpop.f32.mrf.mxu0
  %10114 = vdwg.mxu0
  %v10115 = vld [vmem:[%s13] sm:$0xff]
  %v10116 = vld [vmem:[%s13 + $0x8] sm:$0xff]
  %v10117 = vld [vmem:[%s13 + $0x10] sm:$0xff]
  %v10118 = vld [vmem:[%s13 + $0x18] sm:$0xff]
  %v10120 = vsel %vm458, %v10037, 0
  %v10123 = vsel %vm458, %v10042, 0
  %v10126 = vsel %vm458, %v10047, 0
  %v10129 = vsel %vm458, %v10052, 0
  %v10132 = vsel %vm458, %v10057, 0
  %v10135 = vsel %vm458, %v10062, 0
  %v10138 = vsel %vm458, %v10067, 0
  %v10141 = vsel %vm458, %v10072, 0
  %v10144 = vsel %vm458, %v10077, 0
  %v10147 = vsel %vm458, %v10082, 0
  %v10150 = vsel %vm458, %v10087, 0
  %v10153 = vsel %vm458, %v10092, 0
  %v10156 = vsel %vm458, %v10097, 0
  %v10159 = vsel %vm458, %v10102, 0
  %v10162 = vsel %vm458, %v10107, 0
  %v10165 = vsel %vm458, %v10112, 0
  %10167 = vmatprep.subr.mxu0 0.0
  %10168 = vmatpush1.msra.mxu0 0.0
  %10169 = vmatprep.subr.mxu0 0.0
  %10170 = vmatpush1.msra.mxu0 0.0
  %10171 = vmatprep.subr.mxu0 0.0
  %10172 = vmatpush1.msra.mxu0 0.0
  %10173 = vmatprep.subr.mxu0 0.0
  %10174 = vmatpush1.msra.mxu0 0.0
  %10175 = vmatprep.subr.mxu0 0.0
  %10176 = vmatpush1.msra.mxu0 0.0
  %10177 = vmatprep.subr.mxu0 0.0
  %10178 = vmatpush1.msra.mxu0 0.0
  %10179 = vmatprep.subr.mxu0 0.0
  %10180 = vmatpush1.msra.mxu0 0.0
  %10181 = vmatprep.subr.mxu0 0.0
  %10182 = vmatpush1.msra.mxu0 0.0
  %10183 = vmatprep.subr.mxu0 0.0
  %10184 = vmatpush1.msra.mxu0 0.0
  %10185 = vmatprep.subr.mxu0 0.0
  %10186 = vmatpush1.msra.mxu0 0.0
  %10187 = vmatprep.subr.mxu0 0.0
  %10188 = vmatpush1.msra.mxu0 0.0
  %10189 = vmatprep.subr.mxu0 0.0
  %10190 = vmatpush1.msra.mxu0 0.0
  %10191 = vmatprep.subr.mxu0 0.0
  %10192 = vmatpush1.msra.mxu0 %v10118
  %10193 = vmatprep.subr.mxu0 0.0
  %10194 = vmatpush1.msra.mxu0 %v10117
  %10195 = vmatprep.subr.mxu0 0.0
  %10196 = vmatpush1.msra.mxu0 %v10116
  %10197 = vmatprep.subr.mxu0 0.0
  %10198 = vmatpush1.msra.mxu0 %v10115
  %10199 = vmatprep.subr.mxu0 0.0
  %10200 = vmatpush2.msra.mxu0 0.0
  %10201 = vmatprep.subr.mxu0 0.0
  %10202 = vmatpush2.msra.mxu0 0.0
  %10203 = vmatprep.subr.mxu0 0.0
  %10204 = vmatpush2.msra.mxu0 0.0
  %10205 = vmatprep.subr.mxu0 0.0
  %10206 = vmatpush2.msra.mxu0 0.0
  %10207 = vmatprep.subr.mxu0 0.0
  %10208 = vmatpush2.msra.mxu0 0.0
  %10209 = vmatprep.subr.mxu0 0.0
  %10210 = vmatpush2.msra.mxu0 0.0
  %10211 = vmatprep.subr.mxu0 0.0
  %10212 = vmatpush2.msra.mxu0 0.0
  %10213 = vmatprep.subr.mxu0 0.0
  %10214 = vmatpush2.msra.mxu0 0.0
  %10215 = vmatprep.subr.mxu0 0.0
  %10216 = vmatpush2.msra.mxu0 0.0
  %10217 = vmatprep.subr.mxu0 0.0
  %10218 = vmatpush2.msra.mxu0 0.0
  %10219 = vmatprep.subr.mxu0 0.0
  %10220 = vmatpush2.msra.mxu0 0.0
  %10221 = vmatprep.subr.mxu0 0.0
  %10222 = vmatpush2.msra.mxu0 0.0
  %10223 = vmatprep.subr.mxu0 0.0
  %10224 = vmatpush2.msra.mxu0 0.0
  %10225 = vmatprep.subr.mxu0 0.0
  %10226 = vmatpush2.msra.mxu0 0.0
  %10227 = vmatprep.subr.mxu0 0.0
  %10228 = vmatpush2.msra.mxu0 0.0
  %10229 = vmatprep.subr.mxu0 0.0
  %10230 = vmatpush2.msra.mxu0 0.0
  %10231 = vmatprep.mubr.f32.mxu0 0.0
  %10232 = vmatmul.mubr.f32.gmra.mxu0 %v10120
  %v10233 = vpop.f32.mrf.mxu0
  %v10234 = vadd.f32 0.0, %v10233
  %v10235 = vpop.f32.mrf.mxu0
  %10236 = vmatprep.mubr.f32.mxu0 0.0
  %10237 = vmatmul.mubr.f32.gmra.mxu0 %v10123
  %v10238 = vpop.f32.mrf.mxu0
  %v10239 = vadd.f32 0.0, %v10238
  %v10240 = vpop.f32.mrf.mxu0
  %10241 = vmatprep.mubr.f32.mxu0 0.0
  %10242 = vmatmul.mubr.f32.gmra.mxu0 %v10126
  %v10243 = vpop.f32.mrf.mxu0
  %v10244 = vadd.f32 0.0, %v10243
  %v10245 = vpop.f32.mrf.mxu0
  %10246 = vmatprep.mubr.f32.mxu0 0.0
  %10247 = vmatmul.mubr.f32.gmra.mxu0 %v10129
  %v10248 = vpop.f32.mrf.mxu0
  %v10249 = vadd.f32 0.0, %v10248
  %v10250 = vpop.f32.mrf.mxu0
  %10251 = vmatprep.mubr.f32.mxu0 0.0
  %10252 = vmatmul.mubr.f32.gmra.mxu0 %v10132
  %v10253 = vpop.f32.mrf.mxu0
  %v10254 = vadd.f32 0.0, %v10253
  %v10255 = vpop.f32.mrf.mxu0
  %10256 = vmatprep.mubr.f32.mxu0 0.0
  %10257 = vmatmul.mubr.f32.gmra.mxu0 %v10135
  %v10258 = vpop.f32.mrf.mxu0
  %v10259 = vadd.f32 0.0, %v10258
  %v10260 = vpop.f32.mrf.mxu0
  %10261 = vmatprep.mubr.f32.mxu0 0.0
  %10262 = vmatmul.mubr.f32.gmra.mxu0 %v10138
  %v10263 = vpop.f32.mrf.mxu0
  %v10264 = vadd.f32 0.0, %v10263
  %v10265 = vpop.f32.mrf.mxu0
  %10266 = vmatprep.mubr.f32.mxu0 0.0
  %10267 = vmatmul.mubr.f32.gmra.mxu0 %v10141
  %v10268 = vpop.f32.mrf.mxu0
  %v10269 = vadd.f32 0.0, %v10268
  %v10270 = vpop.f32.mrf.mxu0
  %10271 = vmatprep.mubr.f32.mxu0 0.0
  %10272 = vmatmul.mubr.f32.gmra.mxu0 %v10144
  %v10273 = vpop.f32.mrf.mxu0
  %v10274 = vadd.f32 0.0, %v10273
  %v10275 = vpop.f32.mrf.mxu0
  %10276 = vmatprep.mubr.f32.mxu0 0.0
  %10277 = vmatmul.mubr.f32.gmra.mxu0 %v10147
  %v10278 = vpop.f32.mrf.mxu0
  %v10279 = vadd.f32 0.0, %v10278
  %v10280 = vpop.f32.mrf.mxu0
  %10281 = vmatprep.mubr.f32.mxu0 0.0
  %10282 = vmatmul.mubr.f32.gmra.mxu0 %v10150
  %v10283 = vpop.f32.mrf.mxu0
  %v10284 = vadd.f32 0.0, %v10283
  %v10285 = vpop.f32.mrf.mxu0
  %10286 = vmatprep.mubr.f32.mxu0 0.0
  %10287 = vmatmul.mubr.f32.gmra.mxu0 %v10153
  %v10288 = vpop.f32.mrf.mxu0
  %v10289 = vadd.f32 0.0, %v10288
  %v10290 = vpop.f32.mrf.mxu0
  %10291 = vmatprep.mubr.f32.mxu0 0.0
  %10292 = vmatmul.mubr.f32.gmra.mxu0 %v10156
  %v10293 = vpop.f32.mrf.mxu0
  %v10294 = vadd.f32 0.0, %v10293
  %v10295 = vpop.f32.mrf.mxu0
  %10296 = vmatprep.mubr.f32.mxu0 0.0
  %10297 = vmatmul.mubr.f32.gmra.mxu0 %v10159
  %v10298 = vpop.f32.mrf.mxu0
  %v10299 = vadd.f32 0.0, %v10298
  %v10300 = vpop.f32.mrf.mxu0
  %10301 = vmatprep.mubr.f32.mxu0 0.0
  %10302 = vmatmul.mubr.f32.gmra.mxu0 %v10162
  %v10303 = vpop.f32.mrf.mxu0
  %v10304 = vadd.f32 0.0, %v10303
  %v10305 = vpop.f32.mrf.mxu0
  %10306 = vmatprep.mubr.f32.mxu0 0.0
  %10307 = vmatmul.mubr.f32.gmra.mxu0 %v10165
  %v10308 = vpop.f32.mrf.mxu0
  %v10309 = vadd.f32 0.0, %v10308
  %v10310 = vpop.f32.mrf.mxu0
  %10311 = vdwg.mxu0
  %10312 = vmatprep.subr.mxu0 0.0
  %10313 = vmatpush1.msra.mxu0 0.0
  %10314 = vmatprep.subr.mxu0 0.0
  %10315 = vmatpush1.msra.mxu0 0.0
  %10316 = vmatprep.subr.mxu0 0.0
  %10317 = vmatpush1.msra.mxu0 0.0
  %10318 = vmatprep.subr.mxu0 0.0
  %10319 = vmatpush1.msra.mxu0 0.0
  %10320 = vmatprep.subr.mxu0 0.0
  %10321 = vmatpush1.msra.mxu0 0.0
  %10322 = vmatprep.subr.mxu0 0.0
  %10323 = vmatpush1.msra.mxu0 0.0
  %10324 = vmatprep.subr.mxu0 0.0
  %10325 = vmatpush1.msra.mxu0 0.0
  %10326 = vmatprep.subr.mxu0 0.0
  %10327 = vmatpush1.msra.mxu0 0.0
  %10328 = vmatprep.subr.mxu0 0.0
  %10329 = vmatpush1.msra.mxu0 0.0
  %10330 = vmatprep.subr.mxu0 0.0
  %10331 = vmatpush1.msra.mxu0 0.0
  %10332 = vmatprep.subr.mxu0 0.0
  %10333 = vmatpush1.msra.mxu0 0.0
  %10334 = vmatprep.subr.mxu0 0.0
  %10335 = vmatpush1.msra.mxu0 0.0
  %10336 = vmatprep.subr.mxu0 0.0
  %10337 = vmatpush1.msra.mxu0 0.0
  %10338 = vmatprep.subr.mxu0 0.0
  %10339 = vmatpush1.msra.mxu0 0.0
  %10340 = vmatprep.subr.mxu0 0.0
  %10341 = vmatpush1.msra.mxu0 0.0
  %10342 = vmatprep.subr.mxu0 0.0
  %10343 = vmatpush1.msra.mxu0 %v9953
  %10344 = vmatprep.subr.mxu0 0.0
  %10345 = vmatpush2.msra.mxu0 0.0
  %10346 = vmatprep.subr.mxu0 0.0
  %10347 = vmatpush2.msra.mxu0 0.0
  %10348 = vmatprep.subr.mxu0 0.0
  %10349 = vmatpush2.msra.mxu0 0.0
  %10350 = vmatprep.subr.mxu0 0.0
  %10351 = vmatpush2.msra.mxu0 0.0
  %10352 = vmatprep.subr.mxu0 0.0
  %10353 = vmatpush2.msra.mxu0 0.0
  %10354 = vmatprep.subr.mxu0 0.0
  %10355 = vmatpush2.msra.mxu0 0.0
  %10356 = vmatprep.subr.mxu0 0.0
  %10357 = vmatpush2.msra.mxu0 0.0
  %10358 = vmatprep.subr.mxu0 0.0
  %10359 = vmatpush2.msra.mxu0 0.0
  %10360 = vmatprep.subr.mxu0 0.0
  %10361 = vmatpush2.msra.mxu0 0.0
  %10362 = vmatprep.subr.mxu0 0.0
  %10363 = vmatpush2.msra.mxu0 0.0
  %10364 = vmatprep.subr.mxu0 0.0
  %10365 = vmatpush2.msra.mxu0 0.0
  %10366 = vmatprep.subr.mxu0 0.0
  %10367 = vmatpush2.msra.mxu0 0.0
  %10368 = vmatprep.subr.mxu0 0.0
  %10369 = vmatpush2.msra.mxu0 0.0
  %10370 = vmatprep.subr.mxu0 0.0
  %10371 = vmatpush2.msra.mxu0 0.0
  %10372 = vmatprep.subr.mxu0 0.0
  %10373 = vmatpush2.msra.mxu0 0.0
  %10374 = vmatprep.subr.mxu0 0.0
  %10375 = vmatpush2.msra.mxu0 0.0
  %10376 = vmatprep.mubr.f32.mxu0 0.0
  %10377 = vmatmul.mubr.f32.gmra.mxu0 %v9745
  %v10378 = vpop.f32.mrf.mxu0
  %v10379 = vadd.f32 %v10234, %v10378
  %v10380 = vpop.f32.mrf.mxu0
  %10381 = vmatprep.mubr.f32.mxu0 0.0
  %10382 = vmatmul.mubr.f32.gmra.mxu0 %v9748
  %v10383 = vpop.f32.mrf.mxu0
  %v10384 = vadd.f32 %v10239, %v10383
  %v10385 = vpop.f32.mrf.mxu0
  %10386 = vmatprep.mubr.f32.mxu0 0.0
  %10387 = vmatmul.mubr.f32.gmra.mxu0 %v9751
  %v10388 = vpop.f32.mrf.mxu0
  %v10389 = vadd.f32 %v10244, %v10388
  %v10390 = vpop.f32.mrf.mxu0
  %10391 = vmatprep.mubr.f32.mxu0 0.0
  %10392 = vmatmul.mubr.f32.gmra.mxu0 %v9754
  %v10393 = vpop.f32.mrf.mxu0
  %v10394 = vadd.f32 %v10249, %v10393
  %v10395 = vpop.f32.mrf.mxu0
  %10396 = vmatprep.mubr.f32.mxu0 0.0
  %10397 = vmatmul.mubr.f32.gmra.mxu0 %v9757
  %v10398 = vpop.f32.mrf.mxu0
  %v10399 = vadd.f32 %v10254, %v10398
  %v10400 = vpop.f32.mrf.mxu0
  %10401 = vmatprep.mubr.f32.mxu0 0.0
  %10402 = vmatmul.mubr.f32.gmra.mxu0 %v9760
  %v10403 = vpop.f32.mrf.mxu0
  %v10404 = vadd.f32 %v10259, %v10403
  %v10405 = vpop.f32.mrf.mxu0
  %10406 = vmatprep.mubr.f32.mxu0 0.0
  %10407 = vmatmul.mubr.f32.gmra.mxu0 %v9763
  %v10408 = vpop.f32.mrf.mxu0
  %v10409 = vadd.f32 %v10264, %v10408
  %v10410 = vpop.f32.mrf.mxu0
  %10411 = vmatprep.mubr.f32.mxu0 0.0
  %10412 = vmatmul.mubr.f32.gmra.mxu0 %v9766
  %v10413 = vpop.f32.mrf.mxu0
  %v10414 = vadd.f32 %v10269, %v10413
  %v10415 = vpop.f32.mrf.mxu0
  %10416 = vmatprep.mubr.f32.mxu0 0.0
  %10417 = vmatmul.mubr.f32.gmra.mxu0 %v9769
  %v10418 = vpop.f32.mrf.mxu0
  %v10419 = vadd.f32 %v10274, %v10418
  %v10420 = vpop.f32.mrf.mxu0
  %10421 = vmatprep.mubr.f32.mxu0 0.0
  %10422 = vmatmul.mubr.f32.gmra.mxu0 %v9772
  %v10423 = vpop.f32.mrf.mxu0
  %v10424 = vadd.f32 %v10279, %v10423
  %v10425 = vpop.f32.mrf.mxu0
  %10426 = vmatprep.mubr.f32.mxu0 0.0
  %10427 = vmatmul.mubr.f32.gmra.mxu0 %v9775
  %v10428 = vpop.f32.mrf.mxu0
  %v10429 = vadd.f32 %v10284, %v10428
  %v10430 = vpop.f32.mrf.mxu0
  %10431 = vmatprep.mubr.f32.mxu0 0.0
  %10432 = vmatmul.mubr.f32.gmra.mxu0 %v9778
  %v10433 = vpop.f32.mrf.mxu0
  %v10434 = vadd.f32 %v10289, %v10433
  %v10435 = vpop.f32.mrf.mxu0
  %10436 = vmatprep.mubr.f32.mxu0 0.0
  %10437 = vmatmul.mubr.f32.gmra.mxu0 %v9781
  %v10438 = vpop.f32.mrf.mxu0
  %v10439 = vadd.f32 %v10294, %v10438
  %v10440 = vpop.f32.mrf.mxu0
  %10441 = vmatprep.mubr.f32.mxu0 0.0
  %10442 = vmatmul.mubr.f32.gmra.mxu0 %v9784
  %v10443 = vpop.f32.mrf.mxu0
  %v10444 = vadd.f32 %v10299, %v10443
  %v10445 = vpop.f32.mrf.mxu0
  %10446 = vmatprep.mubr.f32.mxu0 0.0
  %10447 = vmatmul.mubr.f32.gmra.mxu0 %v9787
  %v10448 = vpop.f32.mrf.mxu0
  %v10449 = vadd.f32 %v10304, %v10448
  %v10450 = vpop.f32.mrf.mxu0
  %10451 = vmatprep.mubr.f32.mxu0 0.0
  %10452 = vmatmul.mubr.f32.gmra.mxu0 %v9790
  %v10453 = vpop.f32.mrf.mxu0
  %v10454 = vadd.f32 %v10309, %v10453
  %v10455 = vpop.f32.mrf.mxu0
  %10456 = vdwg.mxu0
  %s10457 = scalar_lea.vmem %s1, 128
  %v10458 = vld [vmem:[%s10457] sm:$0xff]
  %v10459 = vld [vmem:[%s10457 + $0x8] sm:$0xff]
  %v10460 = vld [vmem:[%s10457 + $0x10] sm:$0xff]
  %v10461 = vld [vmem:[%s10457 + $0x18] sm:$0xff]
  %v10462 = vld [vmem:[%s10457 + $0x20] sm:$0xff]
  %v10463 = vld [vmem:[%s10457 + $0x28] sm:$0xff]
  %v10464 = vld [vmem:[%s10457 + $0x30] sm:$0xff]
  %v10465 = vld [vmem:[%s10457 + $0x38] sm:$0xff]
  %v10466 = vld [vmem:[%s10457 + $0x40] sm:$0xff]
  %v10467 = vld [vmem:[%s10457 + $0x48] sm:$0xff]
  %v10468 = vld [vmem:[%s10457 + $0x50] sm:$0xff]
  %v10469 = vld [vmem:[%s10457 + $0x58] sm:$0xff]
  %v10470 = vld [vmem:[%s10457 + $0x60] sm:$0xff]
  %v10471 = vld [vmem:[%s10457 + $0x68] sm:$0xff]
  %v10472 = vld [vmem:[%s10457 + $0x70] sm:$0xff]
  %v10473 = vld [vmem:[%s10457 + $0x78] sm:$0xff]
  %10474 = vmatprep.subr.mxu0 0.0
  %10475 = vmatpush1.msra.mxu0 %v9952
  %10476 = vmatprep.subr.mxu0 0.0
  %10477 = vmatpush1.msra.mxu0 %v9951
  %10478 = vmatprep.subr.mxu0 0.0
  %10479 = vmatpush1.msra.mxu0 %v9950
  %10480 = vmatprep.subr.mxu0 0.0
  %10481 = vmatpush1.msra.mxu0 %v9949
  %10482 = vmatprep.subr.mxu0 0.0
  %10483 = vmatpush1.msra.mxu0 %v9948
  %10484 = vmatprep.subr.mxu0 0.0
  %10485 = vmatpush1.msra.mxu0 %v9947
  %10486 = vmatprep.subr.mxu0 0.0
  %10487 = vmatpush1.msra.mxu0 %v9946
  %10488 = vmatprep.subr.mxu0 0.0
  %10489 = vmatpush1.msra.mxu0 %v9945
  %10490 = vmatprep.subr.mxu0 0.0
  %10491 = vmatpush1.msra.mxu0 %v9944
  %10492 = vmatprep.subr.mxu0 0.0
  %10493 = vmatpush1.msra.mxu0 %v9943
  %10494 = vmatprep.subr.mxu0 0.0
  %10495 = vmatpush1.msra.mxu0 %v9942
  %10496 = vmatprep.subr.mxu0 0.0
  %10497 = vmatpush1.msra.mxu0 %v9941
  %10498 = vmatprep.subr.mxu0 0.0
  %10499 = vmatpush1.msra.mxu0 %v9940
  %10500 = vmatprep.subr.mxu0 0.0
  %10501 = vmatpush1.msra.mxu0 %v9939
  %10502 = vmatprep.subr.mxu0 0.0
  %10503 = vmatpush1.msra.mxu0 %v9938
  %10504 = vmatprep.subr.mxu0 0.0
  %10505 = vmatpush1.msra.mxu0 %v9937
  %10506 = vmatprep.subr.mxu0 0.0
  %10507 = vmatpush2.msra.mxu0 0.0
  %10508 = vmatprep.subr.mxu0 0.0
  %10509 = vmatpush2.msra.mxu0 0.0
  %10510 = vmatprep.subr.mxu0 0.0
  %10511 = vmatpush2.msra.mxu0 0.0
  %10512 = vmatprep.subr.mxu0 0.0
  %10513 = vmatpush2.msra.mxu0 0.0
  %10514 = vmatprep.subr.mxu0 0.0
  %10515 = vmatpush2.msra.mxu0 0.0
  %10516 = vmatprep.subr.mxu0 0.0
  %10517 = vmatpush2.msra.mxu0 0.0
  %10518 = vmatprep.subr.mxu0 0.0
  %10519 = vmatpush2.msra.mxu0 0.0
  %10520 = vmatprep.subr.mxu0 0.0
  %10521 = vmatpush2.msra.mxu0 0.0
  %10522 = vmatprep.subr.mxu0 0.0
  %10523 = vmatpush2.msra.mxu0 0.0
  %10524 = vmatprep.subr.mxu0 0.0
  %10525 = vmatpush2.msra.mxu0 0.0
  %10526 = vmatprep.subr.mxu0 0.0
  %10527 = vmatpush2.msra.mxu0 0.0
  %10528 = vmatprep.subr.mxu0 0.0
  %10529 = vmatpush2.msra.mxu0 0.0
  %10530 = vmatprep.subr.mxu0 0.0
  %10531 = vmatpush2.msra.mxu0 0.0
  %10532 = vmatprep.subr.mxu0 0.0
  %10533 = vmatpush2.msra.mxu0 0.0
  %10534 = vmatprep.subr.mxu0 0.0
  %10535 = vmatpush2.msra.mxu0 0.0
  %10536 = vmatprep.subr.mxu0 0.0
  %10537 = vmatpush2.msra.mxu0 0.0
  %10538 = vmatprep.mubr.f32.mxu0 0.0
  %10539 = vmatmul.mubr.f32.gmra.mxu0 %v10458
  %v10540 = vpop.f32.mrf.mxu0
  %v10541 = vadd.f32 0.0, %v10540
  %v10542 = vpop.f32.mrf.mxu0
  %10543 = vmatprep.mubr.f32.mxu0 0.0
  %10544 = vmatmul.mubr.f32.gmra.mxu0 %v10459
  %v10545 = vpop.f32.mrf.mxu0
  %v10546 = vadd.f32 0.0, %v10545
  %v10547 = vpop.f32.mrf.mxu0
  %10548 = vmatprep.mubr.f32.mxu0 0.0
  %10549 = vmatmul.mubr.f32.gmra.mxu0 %v10460
  %v10550 = vpop.f32.mrf.mxu0
  %v10551 = vadd.f32 0.0, %v10550
  %v10552 = vpop.f32.mrf.mxu0
  %10553 = vmatprep.mubr.f32.mxu0 0.0
  %10554 = vmatmul.mubr.f32.gmra.mxu0 %v10461
  %v10555 = vpop.f32.mrf.mxu0
  %v10556 = vadd.f32 0.0, %v10555
  %v10557 = vpop.f32.mrf.mxu0
  %10558 = vmatprep.mubr.f32.mxu0 0.0
  %10559 = vmatmul.mubr.f32.gmra.mxu0 %v10462
  %v10560 = vpop.f32.mrf.mxu0
  %v10561 = vadd.f32 0.0, %v10560
  %v10562 = vpop.f32.mrf.mxu0
  %10563 = vmatprep.mubr.f32.mxu0 0.0
  %10564 = vmatmul.mubr.f32.gmra.mxu0 %v10463
  %v10565 = vpop.f32.mrf.mxu0
  %v10566 = vadd.f32 0.0, %v10565
  %v10567 = vpop.f32.mrf.mxu0
  %10568 = vmatprep.mubr.f32.mxu0 0.0
  %10569 = vmatmul.mubr.f32.gmra.mxu0 %v10464
  %v10570 = vpop.f32.mrf.mxu0
  %v10571 = vadd.f32 0.0, %v10570
  %v10572 = vpop.f32.mrf.mxu0
  %10573 = vmatprep.mubr.f32.mxu0 0.0
  %10574 = vmatmul.mubr.f32.gmra.mxu0 %v10465
  %v10575 = vpop.f32.mrf.mxu0
  %v10576 = vadd.f32 0.0, %v10575
  %v10577 = vpop.f32.mrf.mxu0
  %10578 = vmatprep.mubr.f32.mxu0 0.0
  %10579 = vmatmul.mubr.f32.gmra.mxu0 %v10466
  %v10580 = vpop.f32.mrf.mxu0
  %v10581 = vadd.f32 0.0, %v10580
  %v10582 = vpop.f32.mrf.mxu0
  %10583 = vmatprep.mubr.f32.mxu0 0.0
  %10584 = vmatmul.mubr.f32.gmra.mxu0 %v10467
  %v10585 = vpop.f32.mrf.mxu0
  %v10586 = vadd.f32 0.0, %v10585
  %v10587 = vpop.f32.mrf.mxu0
  %10588 = vmatprep.mubr.f32.mxu0 0.0
  %10589 = vmatmul.mubr.f32.gmra.mxu0 %v10468
  %v10590 = vpop.f32.mrf.mxu0
  %v10591 = vadd.f32 0.0, %v10590
  %v10592 = vpop.f32.mrf.mxu0
  %10593 = vmatprep.mubr.f32.mxu0 0.0
  %10594 = vmatmul.mubr.f32.gmra.mxu0 %v10469
  %v10595 = vpop.f32.mrf.mxu0
  %v10596 = vadd.f32 0.0, %v10595
  %v10597 = vpop.f32.mrf.mxu0
  %10598 = vmatprep.mubr.f32.mxu0 0.0
  %10599 = vmatmul.mubr.f32.gmra.mxu0 %v10470
  %v10600 = vpop.f32.mrf.mxu0
  %v10601 = vadd.f32 0.0, %v10600
  %v10602 = vpop.f32.mrf.mxu0
  %10603 = vmatprep.mubr.f32.mxu0 0.0
  %10604 = vmatmul.mubr.f32.gmra.mxu0 %v10471
  %v10605 = vpop.f32.mrf.mxu0
  %v10606 = vadd.f32 0.0, %v10605
  %v10607 = vpop.f32.mrf.mxu0
  %10608 = vmatprep.mubr.f32.mxu0 0.0
  %10609 = vmatmul.mubr.f32.gmra.mxu0 %v10472
  %v10610 = vpop.f32.mrf.mxu0
  %v10611 = vadd.f32 0.0, %v10610
  %v10612 = vpop.f32.mrf.mxu0
  %10613 = vmatprep.mubr.f32.mxu0 0.0
  %10614 = vmatmul.mubr.f32.gmra.mxu0 %v10473
  %v10615 = vpop.f32.mrf.mxu0
  %v10616 = vadd.f32 0.0, %v10615
  %v10617 = vpop.f32.mrf.mxu0
  %10618 = vdwg.mxu0
  %s10619 = scalar_lea.vmem %s13, 32
  %v10620 = vld [vmem:[%s10619] sm:$0xff]
  %v10621 = vld [vmem:[%s10619 + $0x8] sm:$0xff]
  %v10622 = vld [vmem:[%s10619 + $0x10] sm:$0xff]
  %v10623 = vld [vmem:[%s10619 + $0x18] sm:$0xff]
  %v10625 = vsel %vm458, %v10541, 0
  %v10628 = vsel %vm458, %v10546, 0
  %v10631 = vsel %vm458, %v10551, 0
  %v10634 = vsel %vm458, %v10556, 0
  %v10637 = vsel %vm458, %v10561, 0
  %v10640 = vsel %vm458, %v10566, 0
  %v10643 = vsel %vm458, %v10571, 0
  %v10646 = vsel %vm458, %v10576, 0
  %v10649 = vsel %vm458, %v10581, 0
  %v10652 = vsel %vm458, %v10586, 0
  %v10655 = vsel %vm458, %v10591, 0
  %v10658 = vsel %vm458, %v10596, 0
  %v10661 = vsel %vm458, %v10601, 0
  %v10664 = vsel %vm458, %v10606, 0
  %v10667 = vsel %vm458, %v10611, 0
  %v10670 = vsel %vm458, %v10616, 0
  %10672 = vmatprep.subr.mxu0 0.0
  %10673 = vmatpush1.msra.mxu0 0.0
  %10674 = vmatprep.subr.mxu0 0.0
  %10675 = vmatpush1.msra.mxu0 0.0
  %10676 = vmatprep.subr.mxu0 0.0
  %10677 = vmatpush1.msra.mxu0 0.0
  %10678 = vmatprep.subr.mxu0 0.0
  %10679 = vmatpush1.msra.mxu0 0.0
  %10680 = vmatprep.subr.mxu0 0.0
  %10681 = vmatpush1.msra.mxu0 0.0
  %10682 = vmatprep.subr.mxu0 0.0
  %10683 = vmatpush1.msra.mxu0 0.0
  %10684 = vmatprep.subr.mxu0 0.0
  %10685 = vmatpush1.msra.mxu0 0.0
  %10686 = vmatprep.subr.mxu0 0.0
  %10687 = vmatpush1.msra.mxu0 0.0
  %10688 = vmatprep.subr.mxu0 0.0
  %10689 = vmatpush1.msra.mxu0 0.0
  %10690 = vmatprep.subr.mxu0 0.0
  %10691 = vmatpush1.msra.mxu0 0.0
  %10692 = vmatprep.subr.mxu0 0.0
  %10693 = vmatpush1.msra.mxu0 0.0
  %10694 = vmatprep.subr.mxu0 0.0
  %10695 = vmatpush1.msra.mxu0 0.0
  %10696 = vmatprep.subr.mxu0 0.0
  %10697 = vmatpush1.msra.mxu0 %v10623
  %10698 = vmatprep.subr.mxu0 0.0
  %10699 = vmatpush1.msra.mxu0 %v10622
  %10700 = vmatprep.subr.mxu0 0.0
  %10701 = vmatpush1.msra.mxu0 %v10621
  %10702 = vmatprep.subr.mxu0 0.0
  %10703 = vmatpush1.msra.mxu0 %v10620
  %10704 = vmatprep.subr.mxu0 0.0
  %10705 = vmatpush2.msra.mxu0 0.0
  %10706 = vmatprep.subr.mxu0 0.0
  %10707 = vmatpush2.msra.mxu0 0.0
  %10708 = vmatprep.subr.mxu0 0.0
  %10709 = vmatpush2.msra.mxu0 0.0
  %10710 = vmatprep.subr.mxu0 0.0
  %10711 = vmatpush2.msra.mxu0 0.0
  %10712 = vmatprep.subr.mxu0 0.0
  %10713 = vmatpush2.msra.mxu0 0.0
  %10714 = vmatprep.subr.mxu0 0.0
  %10715 = vmatpush2.msra.mxu0 0.0
  %10716 = vmatprep.subr.mxu0 0.0
  %10717 = vmatpush2.msra.mxu0 0.0
  %10718 = vmatprep.subr.mxu0 0.0
  %10719 = vmatpush2.msra.mxu0 0.0
  %10720 = vmatprep.subr.mxu0 0.0
  %10721 = vmatpush2.msra.mxu0 0.0
  %10722 = vmatprep.subr.mxu0 0.0
  %10723 = vmatpush2.msra.mxu0 0.0
  %10724 = vmatprep.subr.mxu0 0.0
  %10725 = vmatpush2.msra.mxu0 0.0
  %10726 = vmatprep.subr.mxu0 0.0
  %10727 = vmatpush2.msra.mxu0 0.0
  %10728 = vmatprep.subr.mxu0 0.0
  %10729 = vmatpush2.msra.mxu0 0.0
  %10730 = vmatprep.subr.mxu0 0.0
  %10731 = vmatpush2.msra.mxu0 0.0
  %10732 = vmatprep.subr.mxu0 0.0
  %10733 = vmatpush2.msra.mxu0 0.0
  %10734 = vmatprep.subr.mxu0 0.0
  %10735 = vmatpush2.msra.mxu0 0.0
  %10736 = vmatprep.mubr.f32.mxu0 0.0
  %10737 = vmatmul.mubr.f32.gmra.mxu0 %v10625
  %v10738 = vpop.f32.mrf.mxu0
  %v10739 = vadd.f32 0.0, %v10738
  %v10740 = vpop.f32.mrf.mxu0
  %10741 = vmatprep.mubr.f32.mxu0 0.0
  %10742 = vmatmul.mubr.f32.gmra.mxu0 %v10628
  %v10743 = vpop.f32.mrf.mxu0
  %v10744 = vadd.f32 0.0, %v10743
  %v10745 = vpop.f32.mrf.mxu0
  %10746 = vmatprep.mubr.f32.mxu0 0.0
  %10747 = vmatmul.mubr.f32.gmra.mxu0 %v10631
  %v10748 = vpop.f32.mrf.mxu0
  %v10749 = vadd.f32 0.0, %v10748
  %v10750 = vpop.f32.mrf.mxu0
  %10751 = vmatprep.mubr.f32.mxu0 0.0
  %10752 = vmatmul.mubr.f32.gmra.mxu0 %v10634
  %v10753 = vpop.f32.mrf.mxu0
  %v10754 = vadd.f32 0.0, %v10753
  %v10755 = vpop.f32.mrf.mxu0
  %10756 = vmatprep.mubr.f32.mxu0 0.0
  %10757 = vmatmul.mubr.f32.gmra.mxu0 %v10637
  %v10758 = vpop.f32.mrf.mxu0
  %v10759 = vadd.f32 0.0, %v10758
  %v10760 = vpop.f32.mrf.mxu0
  %10761 = vmatprep.mubr.f32.mxu0 0.0
  %10762 = vmatmul.mubr.f32.gmra.mxu0 %v10640
  %v10763 = vpop.f32.mrf.mxu0
  %v10764 = vadd.f32 0.0, %v10763
  %v10765 = vpop.f32.mrf.mxu0
  %10766 = vmatprep.mubr.f32.mxu0 0.0
  %10767 = vmatmul.mubr.f32.gmra.mxu0 %v10643
  %v10768 = vpop.f32.mrf.mxu0
  %v10769 = vadd.f32 0.0, %v10768
  %v10770 = vpop.f32.mrf.mxu0
  %10771 = vmatprep.mubr.f32.mxu0 0.0
  %10772 = vmatmul.mubr.f32.gmra.mxu0 %v10646
  %v10773 = vpop.f32.mrf.mxu0
  %v10774 = vadd.f32 0.0, %v10773
  %v10775 = vpop.f32.mrf.mxu0
  %10776 = vmatprep.mubr.f32.mxu0 0.0
  %10777 = vmatmul.mubr.f32.gmra.mxu0 %v10649
  %v10778 = vpop.f32.mrf.mxu0
  %v10779 = vadd.f32 0.0, %v10778
  %v10780 = vpop.f32.mrf.mxu0
  %10781 = vmatprep.mubr.f32.mxu0 0.0
  %10782 = vmatmul.mubr.f32.gmra.mxu0 %v10652
  %v10783 = vpop.f32.mrf.mxu0
  %v10784 = vadd.f32 0.0, %v10783
  %v10785 = vpop.f32.mrf.mxu0
  %10786 = vmatprep.mubr.f32.mxu0 0.0
  %10787 = vmatmul.mubr.f32.gmra.mxu0 %v10655
  %v10788 = vpop.f32.mrf.mxu0
  %v10789 = vadd.f32 0.0, %v10788
  %v10790 = vpop.f32.mrf.mxu0
  %10791 = vmatprep.mubr.f32.mxu0 0.0
  %10792 = vmatmul.mubr.f32.gmra.mxu0 %v10658
  %v10793 = vpop.f32.mrf.mxu0
  %v10794 = vadd.f32 0.0, %v10793
  %v10795 = vpop.f32.mrf.mxu0
  %10796 = vmatprep.mubr.f32.mxu0 0.0
  %10797 = vmatmul.mubr.f32.gmra.mxu0 %v10661
  %v10798 = vpop.f32.mrf.mxu0
  %v10799 = vadd.f32 0.0, %v10798
  %v10800 = vpop.f32.mrf.mxu0
  %10801 = vmatprep.mubr.f32.mxu0 0.0
  %10802 = vmatmul.mubr.f32.gmra.mxu0 %v10664
  %v10803 = vpop.f32.mrf.mxu0
  %v10804 = vadd.f32 0.0, %v10803
  %v10805 = vpop.f32.mrf.mxu0
  %10806 = vmatprep.mubr.f32.mxu0 0.0
  %10807 = vmatmul.mubr.f32.gmra.mxu0 %v10667
  %v10808 = vpop.f32.mrf.mxu0
  %v10809 = vadd.f32 0.0, %v10808
  %v10810 = vpop.f32.mrf.mxu0
  %10811 = vmatprep.mubr.f32.mxu0 0.0
  %10812 = vmatmul.mubr.f32.gmra.mxu0 %v10670
  %v10813 = vpop.f32.mrf.mxu0
  %v10814 = vadd.f32 0.0, %v10813
  %v10815 = vpop.f32.mrf.mxu0
  %10816 = vdwg.mxu0
  %v10817 = vadd.f32 %v10379, %v10739
  %v10818 = vadd.f32 %v10384, %v10744
  %v10819 = vadd.f32 %v10389, %v10749
  %v10820 = vadd.f32 %v10394, %v10754
  %v10821 = vadd.f32 %v10399, %v10759
  %v10822 = vadd.f32 %v10404, %v10764
  %v10823 = vadd.f32 %v10409, %v10769
  %v10824 = vadd.f32 %v10414, %v10774
  %v10825 = vadd.f32 %v10419, %v10779
  %v10826 = vadd.f32 %v10424, %v10784
  %v10827 = vadd.f32 %v10429, %v10789
  %v10828 = vadd.f32 %v10434, %v10794
  %v10829 = vadd.f32 %v10439, %v10799
  %v10830 = vadd.f32 %v10444, %v10804
  %v10831 = vadd.f32 %v10449, %v10809
  %v10832 = vadd.f32 %v10454, %v10814
  %s10833 = scalar_lea.vmem %s1, 256
  %v10834 = vld [vmem:[%s10833] sm:$0xff]
  %v10835 = vld [vmem:[%s10833 + $0x8] sm:$0xff]
  %v10836 = vld [vmem:[%s10833 + $0x10] sm:$0xff]
  %v10837 = vld [vmem:[%s10833 + $0x18] sm:$0xff]
  %v10838 = vld [vmem:[%s10833 + $0x20] sm:$0xff]
  %v10839 = vld [vmem:[%s10833 + $0x28] sm:$0xff]
  %v10840 = vld [vmem:[%s10833 + $0x30] sm:$0xff]
  %v10841 = vld [vmem:[%s10833 + $0x38] sm:$0xff]
  %v10842 = vld [vmem:[%s10833 + $0x40] sm:$0xff]
  %v10843 = vld [vmem:[%s10833 + $0x48] sm:$0xff]
  %v10844 = vld [vmem:[%s10833 + $0x50] sm:$0xff]
  %v10845 = vld [vmem:[%s10833 + $0x58] sm:$0xff]
  %v10846 = vld [vmem:[%s10833 + $0x60] sm:$0xff]
  %v10847 = vld [vmem:[%s10833 + $0x68] sm:$0xff]
  %v10848 = vld [vmem:[%s10833 + $0x70] sm:$0xff]
  %v10849 = vld [vmem:[%s10833 + $0x78] sm:$0xff]
  %10850 = vmatprep.subr.mxu0 0.0
  %10851 = vmatpush1.msra.mxu0 %v9952
  %10852 = vmatprep.subr.mxu0 0.0
  %10853 = vmatpush1.msra.mxu0 %v9951
  %10854 = vmatprep.subr.mxu0 0.0
  %10855 = vmatpush1.msra.mxu0 %v9950
  %10856 = vmatprep.subr.mxu0 0.0
  %10857 = vmatpush1.msra.mxu0 %v9949
  %10858 = vmatprep.subr.mxu0 0.0
  %10859 = vmatpush1.msra.mxu0 %v9948
  %10860 = vmatprep.subr.mxu0 0.0
  %10861 = vmatpush1.msra.mxu0 %v9947
  %10862 = vmatprep.subr.mxu0 0.0
  %10863 = vmatpush1.msra.mxu0 %v9946
  %10864 = vmatprep.subr.mxu0 0.0
  %10865 = vmatpush1.msra.mxu0 %v9945
  %10866 = vmatprep.subr.mxu0 0.0
  %10867 = vmatpush1.msra.mxu0 %v9944
  %10868 = vmatprep.subr.mxu0 0.0
  %10869 = vmatpush1.msra.mxu0 %v9943
  %10870 = vmatprep.subr.mxu0 0.0
  %10871 = vmatpush1.msra.mxu0 %v9942
  %10872 = vmatprep.subr.mxu0 0.0
  %10873 = vmatpush1.msra.mxu0 %v9941
  %10874 = vmatprep.subr.mxu0 0.0
  %10875 = vmatpush1.msra.mxu0 %v9940
  %10876 = vmatprep.subr.mxu0 0.0
  %10877 = vmatpush1.msra.mxu0 %v9939
  %10878 = vmatprep.subr.mxu0 0.0
  %10879 = vmatpush1.msra.mxu0 %v9938
  %10880 = vmatprep.subr.mxu0 0.0
  %10881 = vmatpush1.msra.mxu0 %v9937
  %10882 = vmatprep.subr.mxu0 0.0
  %10883 = vmatpush2.msra.mxu0 0.0
  %10884 = vmatprep.subr.mxu0 0.0
  %10885 = vmatpush2.msra.mxu0 0.0
  %10886 = vmatprep.subr.mxu0 0.0
  %10887 = vmatpush2.msra.mxu0 0.0
  %10888 = vmatprep.subr.mxu0 0.0
  %10889 = vmatpush2.msra.mxu0 0.0
  %10890 = vmatprep.subr.mxu0 0.0
  %10891 = vmatpush2.msra.mxu0 0.0
  %10892 = vmatprep.subr.mxu0 0.0
  %10893 = vmatpush2.msra.mxu0 0.0
  %10894 = vmatprep.subr.mxu0 0.0
  %10895 = vmatpush2.msra.mxu0 0.0
  %10896 = vmatprep.subr.mxu0 0.0
  %10897 = vmatpush2.msra.mxu0 0.0
  %10898 = vmatprep.subr.mxu0 0.0
  %10899 = vmatpush2.msra.mxu0 0.0
  %10900 = vmatprep.subr.mxu0 0.0
  %10901 = vmatpush2.msra.mxu0 0.0
  %10902 = vmatprep.subr.mxu0 0.0
  %10903 = vmatpush2.msra.mxu0 0.0
  %10904 = vmatprep.subr.mxu0 0.0
  %10905 = vmatpush2.msra.mxu0 0.0
  %10906 = vmatprep.subr.mxu0 0.0
  %10907 = vmatpush2.msra.mxu0 0.0
  %10908 = vmatprep.subr.mxu0 0.0
  %10909 = vmatpush2.msra.mxu0 0.0
  %10910 = vmatprep.subr.mxu0 0.0
  %10911 = vmatpush2.msra.mxu0 0.0
  %10912 = vmatprep.subr.mxu0 0.0
  %10913 = vmatpush2.msra.mxu0 0.0
  %10914 = vmatprep.mubr.f32.mxu0 0.0
  %10915 = vmatmul.mubr.f32.gmra.mxu0 %v10834
  %v10916 = vpop.f32.mrf.mxu0
  %v10917 = vadd.f32 0.0, %v10916
  %v10918 = vpop.f32.mrf.mxu0
  %10919 = vmatprep.mubr.f32.mxu0 0.0
  %10920 = vmatmul.mubr.f32.gmra.mxu0 %v10835
  %v10921 = vpop.f32.mrf.mxu0
  %v10922 = vadd.f32 0.0, %v10921
  %v10923 = vpop.f32.mrf.mxu0
  %10924 = vmatprep.mubr.f32.mxu0 0.0
  %10925 = vmatmul.mubr.f32.gmra.mxu0 %v10836
  %v10926 = vpop.f32.mrf.mxu0
  %v10927 = vadd.f32 0.0, %v10926
  %v10928 = vpop.f32.mrf.mxu0
  %10929 = vmatprep.mubr.f32.mxu0 0.0
  %10930 = vmatmul.mubr.f32.gmra.mxu0 %v10837
  %v10931 = vpop.f32.mrf.mxu0
  %v10932 = vadd.f32 0.0, %v10931
  %v10933 = vpop.f32.mrf.mxu0
  %10934 = vmatprep.mubr.f32.mxu0 0.0
  %10935 = vmatmul.mubr.f32.gmra.mxu0 %v10838
  %v10936 = vpop.f32.mrf.mxu0
  %v10937 = vadd.f32 0.0, %v10936
  %v10938 = vpop.f32.mrf.mxu0
  %10939 = vmatprep.mubr.f32.mxu0 0.0
  %10940 = vmatmul.mubr.f32.gmra.mxu0 %v10839
  %v10941 = vpop.f32.mrf.mxu0
  %v10942 = vadd.f32 0.0, %v10941
  %v10943 = vpop.f32.mrf.mxu0
  %10944 = vmatprep.mubr.f32.mxu0 0.0
  %10945 = vmatmul.mubr.f32.gmra.mxu0 %v10840
  %v10946 = vpop.f32.mrf.mxu0
  %v10947 = vadd.f32 0.0, %v10946
  %v10948 = vpop.f32.mrf.mxu0
  %10949 = vmatprep.mubr.f32.mxu0 0.0
  %10950 = vmatmul.mubr.f32.gmra.mxu0 %v10841
  %v10951 = vpop.f32.mrf.mxu0
  %v10952 = vadd.f32 0.0, %v10951
  %v10953 = vpop.f32.mrf.mxu0
  %10954 = vmatprep.mubr.f32.mxu0 0.0
  %10955 = vmatmul.mubr.f32.gmra.mxu0 %v10842
  %v10956 = vpop.f32.mrf.mxu0
  %v10957 = vadd.f32 0.0, %v10956
  %v10958 = vpop.f32.mrf.mxu0
  %10959 = vmatprep.mubr.f32.mxu0 0.0
  %10960 = vmatmul.mubr.f32.gmra.mxu0 %v10843
  %v10961 = vpop.f32.mrf.mxu0
  %v10962 = vadd.f32 0.0, %v10961
  %v10963 = vpop.f32.mrf.mxu0
  %10964 = vmatprep.mubr.f32.mxu0 0.0
  %10965 = vmatmul.mubr.f32.gmra.mxu0 %v10844
  %v10966 = vpop.f32.mrf.mxu0
  %v10967 = vadd.f32 0.0, %v10966
  %v10968 = vpop.f32.mrf.mxu0
  %10969 = vmatprep.mubr.f32.mxu0 0.0
  %10970 = vmatmul.mubr.f32.gmra.mxu0 %v10845
  %v10971 = vpop.f32.mrf.mxu0
  %v10972 = vadd.f32 0.0, %v10971
  %v10973 = vpop.f32.mrf.mxu0
  %10974 = vmatprep.mubr.f32.mxu0 0.0
  %10975 = vmatmul.mubr.f32.gmra.mxu0 %v10846
  %v10976 = vpop.f32.mrf.mxu0
  %v10977 = vadd.f32 0.0, %v10976
  %v10978 = vpop.f32.mrf.mxu0
  %10979 = vmatprep.mubr.f32.mxu0 0.0
  %10980 = vmatmul.mubr.f32.gmra.mxu0 %v10847
  %v10981 = vpop.f32.mrf.mxu0
  %v10982 = vadd.f32 0.0, %v10981
  %v10983 = vpop.f32.mrf.mxu0
  %10984 = vmatprep.mubr.f32.mxu0 0.0
  %10985 = vmatmul.mubr.f32.gmra.mxu0 %v10848
  %v10986 = vpop.f32.mrf.mxu0
  %v10987 = vadd.f32 0.0, %v10986
  %v10988 = vpop.f32.mrf.mxu0
  %10989 = vmatprep.mubr.f32.mxu0 0.0
  %10990 = vmatmul.mubr.f32.gmra.mxu0 %v10849
  %v10991 = vpop.f32.mrf.mxu0
  %v10992 = vadd.f32 0.0, %v10991
  %v10993 = vpop.f32.mrf.mxu0
  %10994 = vdwg.mxu0
  %s10995 = scalar_lea.vmem %s13, 64
  %v10996 = vld [vmem:[%s10995] sm:$0xff]
  %v10997 = vld [vmem:[%s10995 + $0x8] sm:$0xff]
  %v10998 = vld [vmem:[%s10995 + $0x10] sm:$0xff]
  %v10999 = vld [vmem:[%s10995 + $0x18] sm:$0xff]
  %v11001 = vsel %vm458, %v10917, 0
  %v11004 = vsel %vm458, %v10922, 0
  %v11007 = vsel %vm458, %v10927, 0
  %v11010 = vsel %vm458, %v10932, 0
  %v11013 = vsel %vm458, %v10937, 0
  %v11016 = vsel %vm458, %v10942, 0
  %v11019 = vsel %vm458, %v10947, 0
  %v11022 = vsel %vm458, %v10952, 0
  %v11025 = vsel %vm458, %v10957, 0
  %v11028 = vsel %vm458, %v10962, 0
  %v11031 = vsel %vm458, %v10967, 0
  %v11034 = vsel %vm458, %v10972, 0
  %v11037 = vsel %vm458, %v10977, 0
  %v11040 = vsel %vm458, %v10982, 0
  %v11043 = vsel %vm458, %v10987, 0
  %v11046 = vsel %vm458, %v10992, 0
  %11048 = vmatprep.subr.mxu0 0.0
  %11049 = vmatpush1.msra.mxu0 0.0
  %11050 = vmatprep.subr.mxu0 0.0
  %11051 = vmatpush1.msra.mxu0 0.0
  %11052 = vmatprep.subr.mxu0 0.0
  %11053 = vmatpush1.msra.mxu0 0.0
  %11054 = vmatprep.subr.mxu0 0.0
  %11055 = vmatpush1.msra.mxu0 0.0
  %11056 = vmatprep.subr.mxu0 0.0
  %11057 = vmatpush1.msra.mxu0 0.0
  %11058 = vmatprep.subr.mxu0 0.0
  %11059 = vmatpush1.msra.mxu0 0.0
  %11060 = vmatprep.subr.mxu0 0.0
  %11061 = vmatpush1.msra.mxu0 0.0
  %11062 = vmatprep.subr.mxu0 0.0
  %11063 = vmatpush1.msra.mxu0 0.0
  %11064 = vmatprep.subr.mxu0 0.0
  %11065 = vmatpush1.msra.mxu0 0.0
  %11066 = vmatprep.subr.mxu0 0.0
  %11067 = vmatpush1.msra.mxu0 0.0
  %11068 = vmatprep.subr.mxu0 0.0
  %11069 = vmatpush1.msra.mxu0 0.0
  %11070 = vmatprep.subr.mxu0 0.0
  %11071 = vmatpush1.msra.mxu0 0.0
  %11072 = vmatprep.subr.mxu0 0.0
  %11073 = vmatpush1.msra.mxu0 %v10999
  %11074 = vmatprep.subr.mxu0 0.0
  %11075 = vmatpush1.msra.mxu0 %v10998
  %11076 = vmatprep.subr.mxu0 0.0
  %11077 = vmatpush1.msra.mxu0 %v10997
  %11078 = vmatprep.subr.mxu0 0.0
  %11079 = vmatpush1.msra.mxu0 %v10996
  %11080 = vmatprep.subr.mxu0 0.0
  %11081 = vmatpush2.msra.mxu0 0.0
  %11082 = vmatprep.subr.mxu0 0.0
  %11083 = vmatpush2.msra.mxu0 0.0
  %11084 = vmatprep.subr.mxu0 0.0
  %11085 = vmatpush2.msra.mxu0 0.0
  %11086 = vmatprep.subr.mxu0 0.0
  %11087 = vmatpush2.msra.mxu0 0.0
  %11088 = vmatprep.subr.mxu0 0.0
  %11089 = vmatpush2.msra.mxu0 0.0
  %11090 = vmatprep.subr.mxu0 0.0
  %11091 = vmatpush2.msra.mxu0 0.0
  %11092 = vmatprep.subr.mxu0 0.0
  %11093 = vmatpush2.msra.mxu0 0.0
  %11094 = vmatprep.subr.mxu0 0.0
  %11095 = vmatpush2.msra.mxu0 0.0
  %11096 = vmatprep.subr.mxu0 0.0
  %11097 = vmatpush2.msra.mxu0 0.0
  %11098 = vmatprep.subr.mxu0 0.0
  %11099 = vmatpush2.msra.mxu0 0.0
  %11100 = vmatprep.subr.mxu0 0.0
  %11101 = vmatpush2.msra.mxu0 0.0
  %11102 = vmatprep.subr.mxu0 0.0
  %11103 = vmatpush2.msra.mxu0 0.0
  %11104 = vmatprep.subr.mxu0 0.0
  %11105 = vmatpush2.msra.mxu0 0.0
  %11106 = vmatprep.subr.mxu0 0.0
  %11107 = vmatpush2.msra.mxu0 0.0
  %11108 = vmatprep.subr.mxu0 0.0
  %11109 = vmatpush2.msra.mxu0 0.0
  %11110 = vmatprep.subr.mxu0 0.0
  %11111 = vmatpush2.msra.mxu0 0.0
  %11112 = vmatprep.mubr.f32.mxu0 0.0
  %11113 = vmatmul.mubr.f32.gmra.mxu0 %v11001
  %v11114 = vpop.f32.mrf.mxu0
  %v11115 = vadd.f32 0.0, %v11114
  %v11116 = vpop.f32.mrf.mxu0
  %11117 = vmatprep.mubr.f32.mxu0 0.0
  %11118 = vmatmul.mubr.f32.gmra.mxu0 %v11004
  %v11119 = vpop.f32.mrf.mxu0
  %v11120 = vadd.f32 0.0, %v11119
  %v11121 = vpop.f32.mrf.mxu0
  %11122 = vmatprep.mubr.f32.mxu0 0.0
  %11123 = vmatmul.mubr.f32.gmra.mxu0 %v11007
  %v11124 = vpop.f32.mrf.mxu0
  %v11125 = vadd.f32 0.0, %v11124
  %v11126 = vpop.f32.mrf.mxu0
  %11127 = vmatprep.mubr.f32.mxu0 0.0
  %11128 = vmatmul.mubr.f32.gmra.mxu0 %v11010
  %v11129 = vpop.f32.mrf.mxu0
  %v11130 = vadd.f32 0.0, %v11129
  %v11131 = vpop.f32.mrf.mxu0
  %11132 = vmatprep.mubr.f32.mxu0 0.0
  %11133 = vmatmul.mubr.f32.gmra.mxu0 %v11013
  %v11134 = vpop.f32.mrf.mxu0
  %v11135 = vadd.f32 0.0, %v11134
  %v11136 = vpop.f32.mrf.mxu0
  %11137 = vmatprep.mubr.f32.mxu0 0.0
  %11138 = vmatmul.mubr.f32.gmra.mxu0 %v11016
  %v11139 = vpop.f32.mrf.mxu0
  %v11140 = vadd.f32 0.0, %v11139
  %v11141 = vpop.f32.mrf.mxu0
  %11142 = vmatprep.mubr.f32.mxu0 0.0
  %11143 = vmatmul.mubr.f32.gmra.mxu0 %v11019
  %v11144 = vpop.f32.mrf.mxu0
  %v11145 = vadd.f32 0.0, %v11144
  %v11146 = vpop.f32.mrf.mxu0
  %11147 = vmatprep.mubr.f32.mxu0 0.0
  %11148 = vmatmul.mubr.f32.gmra.mxu0 %v11022
  %v11149 = vpop.f32.mrf.mxu0
  %v11150 = vadd.f32 0.0, %v11149
  %v11151 = vpop.f32.mrf.mxu0
  %11152 = vmatprep.mubr.f32.mxu0 0.0
  %11153 = vmatmul.mubr.f32.gmra.mxu0 %v11025
  %v11154 = vpop.f32.mrf.mxu0
  %v11155 = vadd.f32 0.0, %v11154
  %v11156 = vpop.f32.mrf.mxu0
  %11157 = vmatprep.mubr.f32.mxu0 0.0
  %11158 = vmatmul.mubr.f32.gmra.mxu0 %v11028
  %v11159 = vpop.f32.mrf.mxu0
  %v11160 = vadd.f32 0.0, %v11159
  %v11161 = vpop.f32.mrf.mxu0
  %11162 = vmatprep.mubr.f32.mxu0 0.0
  %11163 = vmatmul.mubr.f32.gmra.mxu0 %v11031
  %v11164 = vpop.f32.mrf.mxu0
  %v11165 = vadd.f32 0.0, %v11164
  %v11166 = vpop.f32.mrf.mxu0
  %11167 = vmatprep.mubr.f32.mxu0 0.0
  %11168 = vmatmul.mubr.f32.gmra.mxu0 %v11034
  %v11169 = vpop.f32.mrf.mxu0
  %v11170 = vadd.f32 0.0, %v11169
  %v11171 = vpop.f32.mrf.mxu0
  %11172 = vmatprep.mubr.f32.mxu0 0.0
  %11173 = vmatmul.mubr.f32.gmra.mxu0 %v11037
  %v11174 = vpop.f32.mrf.mxu0
  %v11175 = vadd.f32 0.0, %v11174
  %v11176 = vpop.f32.mrf.mxu0
  %11177 = vmatprep.mubr.f32.mxu0 0.0
  %11178 = vmatmul.mubr.f32.gmra.mxu0 %v11040
  %v11179 = vpop.f32.mrf.mxu0
  %v11180 = vadd.f32 0.0, %v11179
  %v11181 = vpop.f32.mrf.mxu0
  %11182 = vmatprep.mubr.f32.mxu0 0.0
  %11183 = vmatmul.mubr.f32.gmra.mxu0 %v11043
  %v11184 = vpop.f32.mrf.mxu0
  %v11185 = vadd.f32 0.0, %v11184
  %v11186 = vpop.f32.mrf.mxu0
  %11187 = vmatprep.mubr.f32.mxu0 0.0
  %11188 = vmatmul.mubr.f32.gmra.mxu0 %v11046
  %v11189 = vpop.f32.mrf.mxu0
  %v11190 = vadd.f32 0.0, %v11189
  %v11191 = vpop.f32.mrf.mxu0
  %11192 = vdwg.mxu0
  %v11193 = vadd.f32 %v10817, %v11115
  %v11194 = vadd.f32 %v10818, %v11120
  %v11195 = vadd.f32 %v10819, %v11125
  %v11196 = vadd.f32 %v10820, %v11130
  %v11197 = vadd.f32 %v10821, %v11135
  %v11198 = vadd.f32 %v10822, %v11140
  %v11199 = vadd.f32 %v10823, %v11145
  %v11200 = vadd.f32 %v10824, %v11150
  %v11201 = vadd.f32 %v10825, %v11155
  %v11202 = vadd.f32 %v10826, %v11160
  %v11203 = vadd.f32 %v10827, %v11165
  %v11204 = vadd.f32 %v10828, %v11170
  %v11205 = vadd.f32 %v10829, %v11175
  %v11206 = vadd.f32 %v10830, %v11180
  %v11207 = vadd.f32 %v10831, %v11185
  %v11208 = vadd.f32 %v10832, %v11190
  %s11209 = scalar_lea.vmem %s1, 768
  %v11210 = vld [vmem:[%s11209] sm:$0xff]
  %v11211 = vld [vmem:[%s11209 + $0x8] sm:$0xff]
  %v11212 = vld [vmem:[%s11209 + $0x10] sm:$0xff]
  %v11213 = vld [vmem:[%s11209 + $0x18] sm:$0xff]
  %v11214 = vld [vmem:[%s11209 + $0x20] sm:$0xff]
  %v11215 = vld [vmem:[%s11209 + $0x28] sm:$0xff]
  %v11216 = vld [vmem:[%s11209 + $0x30] sm:$0xff]
  %v11217 = vld [vmem:[%s11209 + $0x38] sm:$0xff]
  %v11218 = vld [vmem:[%s11209 + $0x40] sm:$0xff]
  %v11219 = vld [vmem:[%s11209 + $0x48] sm:$0xff]
  %v11220 = vld [vmem:[%s11209 + $0x50] sm:$0xff]
  %v11221 = vld [vmem:[%s11209 + $0x58] sm:$0xff]
  %v11222 = vld [vmem:[%s11209 + $0x60] sm:$0xff]
  %v11223 = vld [vmem:[%s11209 + $0x68] sm:$0xff]
  %v11224 = vld [vmem:[%s11209 + $0x70] sm:$0xff]
  %v11225 = vld [vmem:[%s11209 + $0x78] sm:$0xff]
  %11226 = vmatprep.subr.mxu0 0.0
  %11227 = vmatpush1.msra.mxu0 %v9952
  %11228 = vmatprep.subr.mxu0 0.0
  %11229 = vmatpush1.msra.mxu0 %v9951
  %11230 = vmatprep.subr.mxu0 0.0
  %11231 = vmatpush1.msra.mxu0 %v9950
  %11232 = vmatprep.subr.mxu0 0.0
  %11233 = vmatpush1.msra.mxu0 %v9949
  %11234 = vmatprep.subr.mxu0 0.0
  %11235 = vmatpush1.msra.mxu0 %v9948
  %11236 = vmatprep.subr.mxu0 0.0
  %11237 = vmatpush1.msra.mxu0 %v9947
  %11238 = vmatprep.subr.mxu0 0.0
  %11239 = vmatpush1.msra.mxu0 %v9946
  %11240 = vmatprep.subr.mxu0 0.0
  %11241 = vmatpush1.msra.mxu0 %v9945
  %11242 = vmatprep.subr.mxu0 0.0
  %11243 = vmatpush1.msra.mxu0 %v9944
  %11244 = vmatprep.subr.mxu0 0.0
  %11245 = vmatpush1.msra.mxu0 %v9943
  %11246 = vmatprep.subr.mxu0 0.0
  %11247 = vmatpush1.msra.mxu0 %v9942
  %11248 = vmatprep.subr.mxu0 0.0
  %11249 = vmatpush1.msra.mxu0 %v9941
  %11250 = vmatprep.subr.mxu0 0.0
  %11251 = vmatpush1.msra.mxu0 %v9940
  %11252 = vmatprep.subr.mxu0 0.0
  %11253 = vmatpush1.msra.mxu0 %v9939
  %11254 = vmatprep.subr.mxu0 0.0
  %11255 = vmatpush1.msra.mxu0 %v9938
  %11256 = vmatprep.subr.mxu0 0.0
  %11257 = vmatpush1.msra.mxu0 %v9937
  %11258 = vmatprep.subr.mxu0 0.0
  %11259 = vmatpush2.msra.mxu0 0.0
  %11260 = vmatprep.subr.mxu0 0.0
  %11261 = vmatpush2.msra.mxu0 0.0
  %11262 = vmatprep.subr.mxu0 0.0
  %11263 = vmatpush2.msra.mxu0 0.0
  %11264 = vmatprep.subr.mxu0 0.0
  %11265 = vmatpush2.msra.mxu0 0.0
  %11266 = vmatprep.subr.mxu0 0.0
  %11267 = vmatpush2.msra.mxu0 0.0
  %11268 = vmatprep.subr.mxu0 0.0
  %11269 = vmatpush2.msra.mxu0 0.0
  %11270 = vmatprep.subr.mxu0 0.0
  %11271 = vmatpush2.msra.mxu0 0.0
  %11272 = vmatprep.subr.mxu0 0.0
  %11273 = vmatpush2.msra.mxu0 0.0
  %11274 = vmatprep.subr.mxu0 0.0
  %11275 = vmatpush2.msra.mxu0 0.0
  %11276 = vmatprep.subr.mxu0 0.0
  %11277 = vmatpush2.msra.mxu0 0.0
  %11278 = vmatprep.subr.mxu0 0.0
  %11279 = vmatpush2.msra.mxu0 0.0
  %11280 = vmatprep.subr.mxu0 0.0
  %11281 = vmatpush2.msra.mxu0 0.0
  %11282 = vmatprep.subr.mxu0 0.0
  %11283 = vmatpush2.msra.mxu0 0.0
  %11284 = vmatprep.subr.mxu0 0.0
  %11285 = vmatpush2.msra.mxu0 0.0
  %11286 = vmatprep.subr.mxu0 0.0
  %11287 = vmatpush2.msra.mxu0 0.0
  %11288 = vmatprep.subr.mxu0 0.0
  %11289 = vmatpush2.msra.mxu0 0.0
  %11290 = vmatprep.mubr.f32.mxu0 0.0
  %11291 = vmatmul.mubr.f32.gmra.mxu0 %v11210
  %v11292 = vpop.f32.mrf.mxu0
  %v11293 = vadd.f32 0.0, %v11292
  %v11294 = vpop.f32.mrf.mxu0
  %11295 = vmatprep.mubr.f32.mxu0 0.0
  %11296 = vmatmul.mubr.f32.gmra.mxu0 %v11211
  %v11297 = vpop.f32.mrf.mxu0
  %v11298 = vadd.f32 0.0, %v11297
  %v11299 = vpop.f32.mrf.mxu0
  %11300 = vmatprep.mubr.f32.mxu0 0.0
  %11301 = vmatmul.mubr.f32.gmra.mxu0 %v11212
  %v11302 = vpop.f32.mrf.mxu0
  %v11303 = vadd.f32 0.0, %v11302
  %v11304 = vpop.f32.mrf.mxu0
  %11305 = vmatprep.mubr.f32.mxu0 0.0
  %11306 = vmatmul.mubr.f32.gmra.mxu0 %v11213
  %v11307 = vpop.f32.mrf.mxu0
  %v11308 = vadd.f32 0.0, %v11307
  %v11309 = vpop.f32.mrf.mxu0
  %11310 = vmatprep.mubr.f32.mxu0 0.0
  %11311 = vmatmul.mubr.f32.gmra.mxu0 %v11214
  %v11312 = vpop.f32.mrf.mxu0
  %v11313 = vadd.f32 0.0, %v11312
  %v11314 = vpop.f32.mrf.mxu0
  %11315 = vmatprep.mubr.f32.mxu0 0.0
  %11316 = vmatmul.mubr.f32.gmra.mxu0 %v11215
  %v11317 = vpop.f32.mrf.mxu0
  %v11318 = vadd.f32 0.0, %v11317
  %v11319 = vpop.f32.mrf.mxu0
  %11320 = vmatprep.mubr.f32.mxu0 0.0
  %11321 = vmatmul.mubr.f32.gmra.mxu0 %v11216
  %v11322 = vpop.f32.mrf.mxu0
  %v11323 = vadd.f32 0.0, %v11322
  %v11324 = vpop.f32.mrf.mxu0
  %11325 = vmatprep.mubr.f32.mxu0 0.0
  %11326 = vmatmul.mubr.f32.gmra.mxu0 %v11217
  %v11327 = vpop.f32.mrf.mxu0
  %v11328 = vadd.f32 0.0, %v11327
  %v11329 = vpop.f32.mrf.mxu0
  %11330 = vmatprep.mubr.f32.mxu0 0.0
  %11331 = vmatmul.mubr.f32.gmra.mxu0 %v11218
  %v11332 = vpop.f32.mrf.mxu0
  %v11333 = vadd.f32 0.0, %v11332
  %v11334 = vpop.f32.mrf.mxu0
  %11335 = vmatprep.mubr.f32.mxu0 0.0
  %11336 = vmatmul.mubr.f32.gmra.mxu0 %v11219
  %v11337 = vpop.f32.mrf.mxu0
  %v11338 = vadd.f32 0.0, %v11337
  %v11339 = vpop.f32.mrf.mxu0
  %11340 = vmatprep.mubr.f32.mxu0 0.0
  %11341 = vmatmul.mubr.f32.gmra.mxu0 %v11220
  %v11342 = vpop.f32.mrf.mxu0
  %v11343 = vadd.f32 0.0, %v11342
  %v11344 = vpop.f32.mrf.mxu0
  %11345 = vmatprep.mubr.f32.mxu0 0.0
  %11346 = vmatmul.mubr.f32.gmra.mxu0 %v11221
  %v11347 = vpop.f32.mrf.mxu0
  %v11348 = vadd.f32 0.0, %v11347
  %v11349 = vpop.f32.mrf.mxu0
  %11350 = vmatprep.mubr.f32.mxu0 0.0
  %11351 = vmatmul.mubr.f32.gmra.mxu0 %v11222
  %v11352 = vpop.f32.mrf.mxu0
  %v11353 = vadd.f32 0.0, %v11352
  %v11354 = vpop.f32.mrf.mxu0
  %11355 = vmatprep.mubr.f32.mxu0 0.0
  %11356 = vmatmul.mubr.f32.gmra.mxu0 %v11223
  %v11357 = vpop.f32.mrf.mxu0
  %v11358 = vadd.f32 0.0, %v11357
  %v11359 = vpop.f32.mrf.mxu0
  %11360 = vmatprep.mubr.f32.mxu0 0.0
  %11361 = vmatmul.mubr.f32.gmra.mxu0 %v11224
  %v11362 = vpop.f32.mrf.mxu0
  %v11363 = vadd.f32 0.0, %v11362
  %v11364 = vpop.f32.mrf.mxu0
  %11365 = vmatprep.mubr.f32.mxu0 0.0
  %11366 = vmatmul.mubr.f32.gmra.mxu0 %v11225
  %v11367 = vpop.f32.mrf.mxu0
  %v11368 = vadd.f32 0.0, %v11367
  %v11369 = vpop.f32.mrf.mxu0
  %11370 = vdwg.mxu0
  %s11371 = scalar_lea.vmem %s13, 96
  %v11372 = vld [vmem:[%s11371] sm:$0xff]
  %v11373 = vld [vmem:[%s11371 + $0x8] sm:$0xff]
  %v11374 = vld [vmem:[%s11371 + $0x10] sm:$0xff]
  %v11375 = vld [vmem:[%s11371 + $0x18] sm:$0xff]
  %v11377 = vsel %vm458, %v11293, 0
  %v11380 = vsel %vm458, %v11298, 0
  %v11383 = vsel %vm458, %v11303, 0
  %v11386 = vsel %vm458, %v11308, 0
  %v11389 = vsel %vm458, %v11313, 0
  %v11392 = vsel %vm458, %v11318, 0
  %v11395 = vsel %vm458, %v11323, 0
  %v11398 = vsel %vm458, %v11328, 0
  %v11401 = vsel %vm458, %v11333, 0
  %v11404 = vsel %vm458, %v11338, 0
  %v11407 = vsel %vm458, %v11343, 0
  %v11410 = vsel %vm458, %v11348, 0
  %v11413 = vsel %vm458, %v11353, 0
  %v11416 = vsel %vm458, %v11358, 0
  %v11419 = vsel %vm458, %v11363, 0
  %v11422 = vsel %vm458, %v11368, 0
  %11424 = vmatprep.subr.mxu0 0.0
  %11425 = vmatpush1.msra.mxu0 0.0
  %11426 = vmatprep.subr.mxu0 0.0
  %11427 = vmatpush1.msra.mxu0 0.0
  %11428 = vmatprep.subr.mxu0 0.0
  %11429 = vmatpush1.msra.mxu0 0.0
  %11430 = vmatprep.subr.mxu0 0.0
  %11431 = vmatpush1.msra.mxu0 0.0
  %11432 = vmatprep.subr.mxu0 0.0
  %11433 = vmatpush1.msra.mxu0 0.0
  %11434 = vmatprep.subr.mxu0 0.0
  %11435 = vmatpush1.msra.mxu0 0.0
  %11436 = vmatprep.subr.mxu0 0.0
  %11437 = vmatpush1.msra.mxu0 0.0
  %11438 = vmatprep.subr.mxu0 0.0
  %11439 = vmatpush1.msra.mxu0 0.0
  %11440 = vmatprep.subr.mxu0 0.0
  %11441 = vmatpush1.msra.mxu0 0.0
  %11442 = vmatprep.subr.mxu0 0.0
  %11443 = vmatpush1.msra.mxu0 0.0
  %11444 = vmatprep.subr.mxu0 0.0
  %11445 = vmatpush1.msra.mxu0 0.0
  %11446 = vmatprep.subr.mxu0 0.0
  %11447 = vmatpush1.msra.mxu0 0.0
  %11448 = vmatprep.subr.mxu0 0.0
  %11449 = vmatpush1.msra.mxu0 %v11375
  %11450 = vmatprep.subr.mxu0 0.0
  %11451 = vmatpush1.msra.mxu0 %v11374
  %11452 = vmatprep.subr.mxu0 0.0
  %11453 = vmatpush1.msra.mxu0 %v11373
  %11454 = vmatprep.subr.mxu0 0.0
  %11455 = vmatpush1.msra.mxu0 %v11372
  %11456 = vmatprep.subr.mxu0 0.0
  %11457 = vmatpush2.msra.mxu0 0.0
  %11458 = vmatprep.subr.mxu0 0.0
  %11459 = vmatpush2.msra.mxu0 0.0
  %11460 = vmatprep.subr.mxu0 0.0
  %11461 = vmatpush2.msra.mxu0 0.0
  %11462 = vmatprep.subr.mxu0 0.0
  %11463 = vmatpush2.msra.mxu0 0.0
  %11464 = vmatprep.subr.mxu0 0.0
  %11465 = vmatpush2.msra.mxu0 0.0
  %11466 = vmatprep.subr.mxu0 0.0
  %11467 = vmatpush2.msra.mxu0 0.0
  %11468 = vmatprep.subr.mxu0 0.0
  %11469 = vmatpush2.msra.mxu0 0.0
  %11470 = vmatprep.subr.mxu0 0.0
  %11471 = vmatpush2.msra.mxu0 0.0
  %11472 = vmatprep.subr.mxu0 0.0
  %11473 = vmatpush2.msra.mxu0 0.0
  %11474 = vmatprep.subr.mxu0 0.0
  %11475 = vmatpush2.msra.mxu0 0.0
  %11476 = vmatprep.subr.mxu0 0.0
  %11477 = vmatpush2.msra.mxu0 0.0
  %11478 = vmatprep.subr.mxu0 0.0
  %11479 = vmatpush2.msra.mxu0 0.0
  %11480 = vmatprep.subr.mxu0 0.0
  %11481 = vmatpush2.msra.mxu0 0.0
  %11482 = vmatprep.subr.mxu0 0.0
  %11483 = vmatpush2.msra.mxu0 0.0
  %11484 = vmatprep.subr.mxu0 0.0
  %11485 = vmatpush2.msra.mxu0 0.0
  %11486 = vmatprep.subr.mxu0 0.0
  %11487 = vmatpush2.msra.mxu0 0.0
  %11488 = vmatprep.mubr.f32.mxu0 0.0
  %11489 = vmatmul.mubr.f32.gmra.mxu0 %v11377
  %v11490 = vpop.f32.mrf.mxu0
  %v11491 = vadd.f32 0.0, %v11490
  %v11492 = vpop.f32.mrf.mxu0
  %11493 = vmatprep.mubr.f32.mxu0 0.0
  %11494 = vmatmul.mubr.f32.gmra.mxu0 %v11380
  %v11495 = vpop.f32.mrf.mxu0
  %v11496 = vadd.f32 0.0, %v11495
  %v11497 = vpop.f32.mrf.mxu0
  %11498 = vmatprep.mubr.f32.mxu0 0.0
  %11499 = vmatmul.mubr.f32.gmra.mxu0 %v11383
  %v11500 = vpop.f32.mrf.mxu0
  %v11501 = vadd.f32 0.0, %v11500
  %v11502 = vpop.f32.mrf.mxu0
  %11503 = vmatprep.mubr.f32.mxu0 0.0
  %11504 = vmatmul.mubr.f32.gmra.mxu0 %v11386
  %v11505 = vpop.f32.mrf.mxu0
  %v11506 = vadd.f32 0.0, %v11505
  %v11507 = vpop.f32.mrf.mxu0
  %11508 = vmatprep.mubr.f32.mxu0 0.0
  %11509 = vmatmul.mubr.f32.gmra.mxu0 %v11389
  %v11510 = vpop.f32.mrf.mxu0
  %v11511 = vadd.f32 0.0, %v11510
  %v11512 = vpop.f32.mrf.mxu0
  %11513 = vmatprep.mubr.f32.mxu0 0.0
  %11514 = vmatmul.mubr.f32.gmra.mxu0 %v11392
  %v11515 = vpop.f32.mrf.mxu0
  %v11516 = vadd.f32 0.0, %v11515
  %v11517 = vpop.f32.mrf.mxu0
  %11518 = vmatprep.mubr.f32.mxu0 0.0
  %11519 = vmatmul.mubr.f32.gmra.mxu0 %v11395
  %v11520 = vpop.f32.mrf.mxu0
  %v11521 = vadd.f32 0.0, %v11520
  %v11522 = vpop.f32.mrf.mxu0
  %11523 = vmatprep.mubr.f32.mxu0 0.0
  %11524 = vmatmul.mubr.f32.gmra.mxu0 %v11398
  %v11525 = vpop.f32.mrf.mxu0
  %v11526 = vadd.f32 0.0, %v11525
  %v11527 = vpop.f32.mrf.mxu0
  %11528 = vmatprep.mubr.f32.mxu0 0.0
  %11529 = vmatmul.mubr.f32.gmra.mxu0 %v11401
  %v11530 = vpop.f32.mrf.mxu0
  %v11531 = vadd.f32 0.0, %v11530
  %v11532 = vpop.f32.mrf.mxu0
  %11533 = vmatprep.mubr.f32.mxu0 0.0
  %11534 = vmatmul.mubr.f32.gmra.mxu0 %v11404
  %v11535 = vpop.f32.mrf.mxu0
  %v11536 = vadd.f32 0.0, %v11535
  %v11537 = vpop.f32.mrf.mxu0
  %11538 = vmatprep.mubr.f32.mxu0 0.0
  %11539 = vmatmul.mubr.f32.gmra.mxu0 %v11407
  %v11540 = vpop.f32.mrf.mxu0
  %v11541 = vadd.f32 0.0, %v11540
  %v11542 = vpop.f32.mrf.mxu0
  %11543 = vmatprep.mubr.f32.mxu0 0.0
  %11544 = vmatmul.mubr.f32.gmra.mxu0 %v11410
  %v11545 = vpop.f32.mrf.mxu0
  %v11546 = vadd.f32 0.0, %v11545
  %v11547 = vpop.f32.mrf.mxu0
  %11548 = vmatprep.mubr.f32.mxu0 0.0
  %11549 = vmatmul.mubr.f32.gmra.mxu0 %v11413
  %v11550 = vpop.f32.mrf.mxu0
  %v11551 = vadd.f32 0.0, %v11550
  %v11552 = vpop.f32.mrf.mxu0
  %11553 = vmatprep.mubr.f32.mxu0 0.0
  %11554 = vmatmul.mubr.f32.gmra.mxu0 %v11416
  %v11555 = vpop.f32.mrf.mxu0
  %v11556 = vadd.f32 0.0, %v11555
  %v11557 = vpop.f32.mrf.mxu0
  %11558 = vmatprep.mubr.f32.mxu0 0.0
  %11559 = vmatmul.mubr.f32.gmra.mxu0 %v11419
  %v11560 = vpop.f32.mrf.mxu0
  %v11561 = vadd.f32 0.0, %v11560
  %v11562 = vpop.f32.mrf.mxu0
  %11563 = vmatprep.mubr.f32.mxu0 0.0
  %11564 = vmatmul.mubr.f32.gmra.mxu0 %v11422
  %v11565 = vpop.f32.mrf.mxu0
  %v11566 = vadd.f32 0.0, %v11565
  %v11567 = vpop.f32.mrf.mxu0
  %11568 = vdwg.mxu0
  %v11569 = vadd.f32 %v11193, %v11491
  %v11570 = vadd.f32 %v11194, %v11496
  %v11571 = vadd.f32 %v11195, %v11501
  %v11572 = vadd.f32 %v11196, %v11506
  %v11573 = vadd.f32 %v11197, %v11511
  %v11574 = vadd.f32 %v11198, %v11516
  %v11575 = vadd.f32 %v11199, %v11521
  %v11576 = vadd.f32 %v11200, %v11526
  %v11577 = vadd.f32 %v11201, %v11531
  %v11578 = vadd.f32 %v11202, %v11536
  %v11579 = vadd.f32 %v11203, %v11541
  %v11580 = vadd.f32 %v11204, %v11546
  %v11581 = vadd.f32 %v11205, %v11551
  %v11582 = vadd.f32 %v11206, %v11556
  %v11583 = vadd.f32 %v11207, %v11561
  %v11584 = vadd.f32 %v11208, %v11566
  %s11585 = scalar_lea.vmem %s13, 128
  %v11586 = vld [vmem:[%s11585] sm:$0xff]
  %v11587 = vld [vmem:[%s11585 + $0x8] sm:$0xff]
  %v11588 = vld [vmem:[%s11585 + $0x10] sm:$0xff]
  %v11589 = vld [vmem:[%s11585 + $0x18] sm:$0xff]
  %v11591 = vsel %vm458, %v9937, 0
  %v11594 = vsel %vm458, %v9938, 0
  %v11597 = vsel %vm458, %v9939, 0
  %v11600 = vsel %vm458, %v9940, 0
  %v11603 = vsel %vm458, %v9941, 0
  %v11606 = vsel %vm458, %v9942, 0
  %v11609 = vsel %vm458, %v9943, 0
  %v11612 = vsel %vm458, %v9944, 0
  %v11615 = vsel %vm458, %v9945, 0
  %v11618 = vsel %vm458, %v9946, 0
  %v11621 = vsel %vm458, %v9947, 0
  %v11624 = vsel %vm458, %v9948, 0
  %v11627 = vsel %vm458, %v9949, 0
  %v11630 = vsel %vm458, %v9950, 0
  %v11633 = vsel %vm458, %v9951, 0
  %v11636 = vsel %vm458, %v9952, 0
  %11638 = vmatprep.subr.mxu0 0.0
  %11639 = vmatpush1.msra.mxu0 0.0
  %11640 = vmatprep.subr.mxu0 0.0
  %11641 = vmatpush1.msra.mxu0 0.0
  %11642 = vmatprep.subr.mxu0 0.0
  %11643 = vmatpush1.msra.mxu0 0.0
  %11644 = vmatprep.subr.mxu0 0.0
  %11645 = vmatpush1.msra.mxu0 0.0
  %11646 = vmatprep.subr.mxu0 0.0
  %11647 = vmatpush1.msra.mxu0 0.0
  %11648 = vmatprep.subr.mxu0 0.0
  %11649 = vmatpush1.msra.mxu0 0.0
  %11650 = vmatprep.subr.mxu0 0.0
  %11651 = vmatpush1.msra.mxu0 0.0
  %11652 = vmatprep.subr.mxu0 0.0
  %11653 = vmatpush1.msra.mxu0 0.0
  %11654 = vmatprep.subr.mxu0 0.0
  %11655 = vmatpush1.msra.mxu0 0.0
  %11656 = vmatprep.subr.mxu0 0.0
  %11657 = vmatpush1.msra.mxu0 0.0
  %11658 = vmatprep.subr.mxu0 0.0
  %11659 = vmatpush1.msra.mxu0 0.0
  %11660 = vmatprep.subr.mxu0 0.0
  %11661 = vmatpush1.msra.mxu0 0.0
  %11662 = vmatprep.subr.mxu0 0.0
  %11663 = vmatpush1.msra.mxu0 %v11589
  %11664 = vmatprep.subr.mxu0 0.0
  %11665 = vmatpush1.msra.mxu0 %v11588
  %11666 = vmatprep.subr.mxu0 0.0
  %11667 = vmatpush1.msra.mxu0 %v11587
  %11668 = vmatprep.subr.mxu0 0.0
  %11669 = vmatpush1.msra.mxu0 %v11586
  %11670 = vmatprep.subr.mxu0 0.0
  %11671 = vmatpush2.msra.mxu0 0.0
  %11672 = vmatprep.subr.mxu0 0.0
  %11673 = vmatpush2.msra.mxu0 0.0
  %11674 = vmatprep.subr.mxu0 0.0
  %11675 = vmatpush2.msra.mxu0 0.0
  %11676 = vmatprep.subr.mxu0 0.0
  %11677 = vmatpush2.msra.mxu0 0.0
  %11678 = vmatprep.subr.mxu0 0.0
  %11679 = vmatpush2.msra.mxu0 0.0
  %11680 = vmatprep.subr.mxu0 0.0
  %11681 = vmatpush2.msra.mxu0 0.0
  %11682 = vmatprep.subr.mxu0 0.0
  %11683 = vmatpush2.msra.mxu0 0.0
  %11684 = vmatprep.subr.mxu0 0.0
  %11685 = vmatpush2.msra.mxu0 0.0
  %11686 = vmatprep.subr.mxu0 0.0
  %11687 = vmatpush2.msra.mxu0 0.0
  %11688 = vmatprep.subr.mxu0 0.0
  %11689 = vmatpush2.msra.mxu0 0.0
  %11690 = vmatprep.subr.mxu0 0.0
  %11691 = vmatpush2.msra.mxu0 0.0
  %11692 = vmatprep.subr.mxu0 0.0
  %11693 = vmatpush2.msra.mxu0 0.0
  %11694 = vmatprep.subr.mxu0 0.0
  %11695 = vmatpush2.msra.mxu0 0.0
  %11696 = vmatprep.subr.mxu0 0.0
  %11697 = vmatpush2.msra.mxu0 0.0
  %11698 = vmatprep.subr.mxu0 0.0
  %11699 = vmatpush2.msra.mxu0 0.0
  %11700 = vmatprep.subr.mxu0 0.0
  %11701 = vmatpush2.msra.mxu0 0.0
  %11702 = vmatprep.mubr.f32.mxu0 0.0
  %11703 = vmatmul.mubr.f32.gmra.mxu0 %v11591
  %v11704 = vpop.f32.mrf.mxu0
  %v11705 = vadd.f32 0.0, %v11704
  %v11706 = vpop.f32.mrf.mxu0
  %11707 = vmatprep.mubr.f32.mxu0 0.0
  %11708 = vmatmul.mubr.f32.gmra.mxu0 %v11594
  %v11709 = vpop.f32.mrf.mxu0
  %v11710 = vadd.f32 0.0, %v11709
  %v11711 = vpop.f32.mrf.mxu0
  %11712 = vmatprep.mubr.f32.mxu0 0.0
  %11713 = vmatmul.mubr.f32.gmra.mxu0 %v11597
  %v11714 = vpop.f32.mrf.mxu0
  %v11715 = vadd.f32 0.0, %v11714
  %v11716 = vpop.f32.mrf.mxu0
  %11717 = vmatprep.mubr.f32.mxu0 0.0
  %11718 = vmatmul.mubr.f32.gmra.mxu0 %v11600
  %v11719 = vpop.f32.mrf.mxu0
  %v11720 = vadd.f32 0.0, %v11719
  %v11721 = vpop.f32.mrf.mxu0
  %11722 = vmatprep.mubr.f32.mxu0 0.0
  %11723 = vmatmul.mubr.f32.gmra.mxu0 %v11603
  %v11724 = vpop.f32.mrf.mxu0
  %v11725 = vadd.f32 0.0, %v11724
  %v11726 = vpop.f32.mrf.mxu0
  %11727 = vmatprep.mubr.f32.mxu0 0.0
  %11728 = vmatmul.mubr.f32.gmra.mxu0 %v11606
  %v11729 = vpop.f32.mrf.mxu0
  %v11730 = vadd.f32 0.0, %v11729
  %v11731 = vpop.f32.mrf.mxu0
  %11732 = vmatprep.mubr.f32.mxu0 0.0
  %11733 = vmatmul.mubr.f32.gmra.mxu0 %v11609
  %v11734 = vpop.f32.mrf.mxu0
  %v11735 = vadd.f32 0.0, %v11734
  %v11736 = vpop.f32.mrf.mxu0
  %11737 = vmatprep.mubr.f32.mxu0 0.0
  %11738 = vmatmul.mubr.f32.gmra.mxu0 %v11612
  %v11739 = vpop.f32.mrf.mxu0
  %v11740 = vadd.f32 0.0, %v11739
  %v11741 = vpop.f32.mrf.mxu0
  %11742 = vmatprep.mubr.f32.mxu0 0.0
  %11743 = vmatmul.mubr.f32.gmra.mxu0 %v11615
  %v11744 = vpop.f32.mrf.mxu0
  %v11745 = vadd.f32 0.0, %v11744
  %v11746 = vpop.f32.mrf.mxu0
  %11747 = vmatprep.mubr.f32.mxu0 0.0
  %11748 = vmatmul.mubr.f32.gmra.mxu0 %v11618
  %v11749 = vpop.f32.mrf.mxu0
  %v11750 = vadd.f32 0.0, %v11749
  %v11751 = vpop.f32.mrf.mxu0
  %11752 = vmatprep.mubr.f32.mxu0 0.0
  %11753 = vmatmul.mubr.f32.gmra.mxu0 %v11621
  %v11754 = vpop.f32.mrf.mxu0
  %v11755 = vadd.f32 0.0, %v11754
  %v11756 = vpop.f32.mrf.mxu0
  %11757 = vmatprep.mubr.f32.mxu0 0.0
  %11758 = vmatmul.mubr.f32.gmra.mxu0 %v11624
  %v11759 = vpop.f32.mrf.mxu0
  %v11760 = vadd.f32 0.0, %v11759
  %v11761 = vpop.f32.mrf.mxu0
  %11762 = vmatprep.mubr.f32.mxu0 0.0
  %11763 = vmatmul.mubr.f32.gmra.mxu0 %v11627
  %v11764 = vpop.f32.mrf.mxu0
  %v11765 = vadd.f32 0.0, %v11764
  %v11766 = vpop.f32.mrf.mxu0
  %11767 = vmatprep.mubr.f32.mxu0 0.0
  %11768 = vmatmul.mubr.f32.gmra.mxu0 %v11630
  %v11769 = vpop.f32.mrf.mxu0
  %v11770 = vadd.f32 0.0, %v11769
  %v11771 = vpop.f32.mrf.mxu0
  %11772 = vmatprep.mubr.f32.mxu0 0.0
  %11773 = vmatmul.mubr.f32.gmra.mxu0 %v11633
  %v11774 = vpop.f32.mrf.mxu0
  %v11775 = vadd.f32 0.0, %v11774
  %v11776 = vpop.f32.mrf.mxu0
  %11777 = vmatprep.mubr.f32.mxu0 0.0
  %11778 = vmatmul.mubr.f32.gmra.mxu0 %v11636
  %v11779 = vpop.f32.mrf.mxu0
  %v11780 = vadd.f32 0.0, %v11779
  %v11781 = vpop.f32.mrf.mxu0
  %11782 = vdwg.mxu0
  %v11783 = vadd.f32 %v11569, %v11705
  %v11784 = vadd.f32 %v11570, %v11710
  %v11785 = vadd.f32 %v11571, %v11715
  %v11786 = vadd.f32 %v11572, %v11720
  %v11787 = vadd.f32 %v11573, %v11725
  %v11788 = vadd.f32 %v11574, %v11730
  %v11789 = vadd.f32 %v11575, %v11735
  %v11790 = vadd.f32 %v11576, %v11740
  %v11791 = vadd.f32 %v11577, %v11745
  %v11792 = vadd.f32 %v11578, %v11750
  %v11793 = vadd.f32 %v11579, %v11755
  %v11794 = vadd.f32 %v11580, %v11760
  %v11795 = vadd.f32 %v11581, %v11765
  %v11796 = vadd.f32 %v11582, %v11770
  %v11797 = vadd.f32 %v11583, %v11775
  %v11798 = vadd.f32 %v11584, %v11780
  %s11799 = scalar_lea.vmem %s1, 1152
  %v11800 = vld [vmem:[%s11799] sm:$0xff]
  %v11801 = vld [vmem:[%s11799 + $0x8] sm:$0xff]
  %v11802 = vld [vmem:[%s11799 + $0x10] sm:$0xff]
  %v11803 = vld [vmem:[%s11799 + $0x18] sm:$0xff]
  %v11804 = vld [vmem:[%s11799 + $0x20] sm:$0xff]
  %v11805 = vld [vmem:[%s11799 + $0x28] sm:$0xff]
  %v11806 = vld [vmem:[%s11799 + $0x30] sm:$0xff]
  %v11807 = vld [vmem:[%s11799 + $0x38] sm:$0xff]
  %v11808 = vld [vmem:[%s11799 + $0x40] sm:$0xff]
  %v11809 = vld [vmem:[%s11799 + $0x48] sm:$0xff]
  %v11810 = vld [vmem:[%s11799 + $0x50] sm:$0xff]
  %v11811 = vld [vmem:[%s11799 + $0x58] sm:$0xff]
  %v11812 = vld [vmem:[%s11799 + $0x60] sm:$0xff]
  %v11813 = vld [vmem:[%s11799 + $0x68] sm:$0xff]
  %v11814 = vld [vmem:[%s11799 + $0x70] sm:$0xff]
  %v11815 = vld [vmem:[%s11799 + $0x78] sm:$0xff]
  %11816 = vmatprep.subr.mxu0 0.0
  %11817 = vmatpush1.msra.mxu0 %v9952
  %11818 = vmatprep.subr.mxu0 0.0
  %11819 = vmatpush1.msra.mxu0 %v9951
  %11820 = vmatprep.subr.mxu0 0.0
  %11821 = vmatpush1.msra.mxu0 %v9950
  %11822 = vmatprep.subr.mxu0 0.0
  %11823 = vmatpush1.msra.mxu0 %v9949
  %11824 = vmatprep.subr.mxu0 0.0
  %11825 = vmatpush1.msra.mxu0 %v9948
  %11826 = vmatprep.subr.mxu0 0.0
  %11827 = vmatpush1.msra.mxu0 %v9947
  %11828 = vmatprep.subr.mxu0 0.0
  %11829 = vmatpush1.msra.mxu0 %v9946
  %11830 = vmatprep.subr.mxu0 0.0
  %11831 = vmatpush1.msra.mxu0 %v9945
  %11832 = vmatprep.subr.mxu0 0.0
  %11833 = vmatpush1.msra.mxu0 %v9944
  %11834 = vmatprep.subr.mxu0 0.0
  %11835 = vmatpush1.msra.mxu0 %v9943
  %11836 = vmatprep.subr.mxu0 0.0
  %11837 = vmatpush1.msra.mxu0 %v9942
  %11838 = vmatprep.subr.mxu0 0.0
  %11839 = vmatpush1.msra.mxu0 %v9941
  %11840 = vmatprep.subr.mxu0 0.0
  %11841 = vmatpush1.msra.mxu0 %v9940
  %11842 = vmatprep.subr.mxu0 0.0
  %11843 = vmatpush1.msra.mxu0 %v9939
  %11844 = vmatprep.subr.mxu0 0.0
  %11845 = vmatpush1.msra.mxu0 %v9938
  %11846 = vmatprep.subr.mxu0 0.0
  %11847 = vmatpush1.msra.mxu0 %v9937
  %11848 = vmatprep.subr.mxu0 0.0
  %11849 = vmatpush2.msra.mxu0 0.0
  %11850 = vmatprep.subr.mxu0 0.0
  %11851 = vmatpush2.msra.mxu0 0.0
  %11852 = vmatprep.subr.mxu0 0.0
  %11853 = vmatpush2.msra.mxu0 0.0
  %11854 = vmatprep.subr.mxu0 0.0
  %11855 = vmatpush2.msra.mxu0 0.0
  %11856 = vmatprep.subr.mxu0 0.0
  %11857 = vmatpush2.msra.mxu0 0.0
  %11858 = vmatprep.subr.mxu0 0.0
  %11859 = vmatpush2.msra.mxu0 0.0
  %11860 = vmatprep.subr.mxu0 0.0
  %11861 = vmatpush2.msra.mxu0 0.0
  %11862 = vmatprep.subr.mxu0 0.0
  %11863 = vmatpush2.msra.mxu0 0.0
  %11864 = vmatprep.subr.mxu0 0.0
  %11865 = vmatpush2.msra.mxu0 0.0
  %11866 = vmatprep.subr.mxu0 0.0
  %11867 = vmatpush2.msra.mxu0 0.0
  %11868 = vmatprep.subr.mxu0 0.0
  %11869 = vmatpush2.msra.mxu0 0.0
  %11870 = vmatprep.subr.mxu0 0.0
  %11871 = vmatpush2.msra.mxu0 0.0
  %11872 = vmatprep.subr.mxu0 0.0
  %11873 = vmatpush2.msra.mxu0 0.0
  %11874 = vmatprep.subr.mxu0 0.0
  %11875 = vmatpush2.msra.mxu0 0.0
  %11876 = vmatprep.subr.mxu0 0.0
  %11877 = vmatpush2.msra.mxu0 0.0
  %11878 = vmatprep.subr.mxu0 0.0
  %11879 = vmatpush2.msra.mxu0 0.0
  %11880 = vmatprep.mubr.f32.mxu0 0.0
  %11881 = vmatmul.mubr.f32.gmra.mxu0 %v11800
  %v11882 = vpop.f32.mrf.mxu0
  %v11883 = vadd.f32 0.0, %v11882
  %v11884 = vpop.f32.mrf.mxu0
  %11885 = vmatprep.mubr.f32.mxu0 0.0
  %11886 = vmatmul.mubr.f32.gmra.mxu0 %v11801
  %v11887 = vpop.f32.mrf.mxu0
  %v11888 = vadd.f32 0.0, %v11887
  %v11889 = vpop.f32.mrf.mxu0
  %11890 = vmatprep.mubr.f32.mxu0 0.0
  %11891 = vmatmul.mubr.f32.gmra.mxu0 %v11802
  %v11892 = vpop.f32.mrf.mxu0
  %v11893 = vadd.f32 0.0, %v11892
  %v11894 = vpop.f32.mrf.mxu0
  %11895 = vmatprep.mubr.f32.mxu0 0.0
  %11896 = vmatmul.mubr.f32.gmra.mxu0 %v11803
  %v11897 = vpop.f32.mrf.mxu0
  %v11898 = vadd.f32 0.0, %v11897
  %v11899 = vpop.f32.mrf.mxu0
  %11900 = vmatprep.mubr.f32.mxu0 0.0
  %11901 = vmatmul.mubr.f32.gmra.mxu0 %v11804
  %v11902 = vpop.f32.mrf.mxu0
  %v11903 = vadd.f32 0.0, %v11902
  %v11904 = vpop.f32.mrf.mxu0
  %11905 = vmatprep.mubr.f32.mxu0 0.0
  %11906 = vmatmul.mubr.f32.gmra.mxu0 %v11805
  %v11907 = vpop.f32.mrf.mxu0
  %v11908 = vadd.f32 0.0, %v11907
  %v11909 = vpop.f32.mrf.mxu0
  %11910 = vmatprep.mubr.f32.mxu0 0.0
  %11911 = vmatmul.mubr.f32.gmra.mxu0 %v11806
  %v11912 = vpop.f32.mrf.mxu0
  %v11913 = vadd.f32 0.0, %v11912
  %v11914 = vpop.f32.mrf.mxu0
  %11915 = vmatprep.mubr.f32.mxu0 0.0
  %11916 = vmatmul.mubr.f32.gmra.mxu0 %v11807
  %v11917 = vpop.f32.mrf.mxu0
  %v11918 = vadd.f32 0.0, %v11917
  %v11919 = vpop.f32.mrf.mxu0
  %11920 = vmatprep.mubr.f32.mxu0 0.0
  %11921 = vmatmul.mubr.f32.gmra.mxu0 %v11808
  %v11922 = vpop.f32.mrf.mxu0
  %v11923 = vadd.f32 0.0, %v11922
  %v11924 = vpop.f32.mrf.mxu0
  %11925 = vmatprep.mubr.f32.mxu0 0.0
  %11926 = vmatmul.mubr.f32.gmra.mxu0 %v11809
  %v11927 = vpop.f32.mrf.mxu0
  %v11928 = vadd.f32 0.0, %v11927
  %v11929 = vpop.f32.mrf.mxu0
  %11930 = vmatprep.mubr.f32.mxu0 0.0
  %11931 = vmatmul.mubr.f32.gmra.mxu0 %v11810
  %v11932 = vpop.f32.mrf.mxu0
  %v11933 = vadd.f32 0.0, %v11932
  %v11934 = vpop.f32.mrf.mxu0
  %11935 = vmatprep.mubr.f32.mxu0 0.0
  %11936 = vmatmul.mubr.f32.gmra.mxu0 %v11811
  %v11937 = vpop.f32.mrf.mxu0
  %v11938 = vadd.f32 0.0, %v11937
  %v11939 = vpop.f32.mrf.mxu0
  %11940 = vmatprep.mubr.f32.mxu0 0.0
  %11941 = vmatmul.mubr.f32.gmra.mxu0 %v11812
  %v11942 = vpop.f32.mrf.mxu0
  %v11943 = vadd.f32 0.0, %v11942
  %v11944 = vpop.f32.mrf.mxu0
  %11945 = vmatprep.mubr.f32.mxu0 0.0
  %11946 = vmatmul.mubr.f32.gmra.mxu0 %v11813
  %v11947 = vpop.f32.mrf.mxu0
  %v11948 = vadd.f32 0.0, %v11947
  %v11949 = vpop.f32.mrf.mxu0
  %11950 = vmatprep.mubr.f32.mxu0 0.0
  %11951 = vmatmul.mubr.f32.gmra.mxu0 %v11814
  %v11952 = vpop.f32.mrf.mxu0
  %v11953 = vadd.f32 0.0, %v11952
  %v11954 = vpop.f32.mrf.mxu0
  %11955 = vmatprep.mubr.f32.mxu0 0.0
  %11956 = vmatmul.mubr.f32.gmra.mxu0 %v11815
  %v11957 = vpop.f32.mrf.mxu0
  %v11958 = vadd.f32 0.0, %v11957
  %v11959 = vpop.f32.mrf.mxu0
  %11960 = vdwg.mxu0
  %s11961 = scalar_lea.vmem %s13, 160
  %v11962 = vld [vmem:[%s11961] sm:$0xff]
  %v11963 = vld [vmem:[%s11961 + $0x8] sm:$0xff]
  %v11964 = vld [vmem:[%s11961 + $0x10] sm:$0xff]
  %v11965 = vld [vmem:[%s11961 + $0x18] sm:$0xff]
  %v11967 = vsel %vm458, %v11883, 0
  %v11970 = vsel %vm458, %v11888, 0
  %v11973 = vsel %vm458, %v11893, 0
  %v11976 = vsel %vm458, %v11898, 0
  %v11979 = vsel %vm458, %v11903, 0
  %v11982 = vsel %vm458, %v11908, 0
  %v11985 = vsel %vm458, %v11913, 0
  %v11988 = vsel %vm458, %v11918, 0
  %v11991 = vsel %vm458, %v11923, 0
  %v11994 = vsel %vm458, %v11928, 0
  %v11997 = vsel %vm458, %v11933, 0
  %v12000 = vsel %vm458, %v11938, 0
  %v12003 = vsel %vm458, %v11943, 0
  %v12006 = vsel %vm458, %v11948, 0
  %v12009 = vsel %vm458, %v11953, 0
  %v12012 = vsel %vm458, %v11958, 0
  %12014 = vmatprep.subr.mxu0 0.0
  %12015 = vmatpush1.msra.mxu0 0.0
  %12016 = vmatprep.subr.mxu0 0.0
  %12017 = vmatpush1.msra.mxu0 0.0
  %12018 = vmatprep.subr.mxu0 0.0
  %12019 = vmatpush1.msra.mxu0 0.0
  %12020 = vmatprep.subr.mxu0 0.0
  %12021 = vmatpush1.msra.mxu0 0.0
  %12022 = vmatprep.subr.mxu0 0.0
  %12023 = vmatpush1.msra.mxu0 0.0
  %12024 = vmatprep.subr.mxu0 0.0
  %12025 = vmatpush1.msra.mxu0 0.0
  %12026 = vmatprep.subr.mxu0 0.0
  %12027 = vmatpush1.msra.mxu0 0.0
  %12028 = vmatprep.subr.mxu0 0.0
  %12029 = vmatpush1.msra.mxu0 0.0
  %12030 = vmatprep.subr.mxu0 0.0
  %12031 = vmatpush1.msra.mxu0 0.0
  %12032 = vmatprep.subr.mxu0 0.0
  %12033 = vmatpush1.msra.mxu0 0.0
  %12034 = vmatprep.subr.mxu0 0.0
  %12035 = vmatpush1.msra.mxu0 0.0
  %12036 = vmatprep.subr.mxu0 0.0
  %12037 = vmatpush1.msra.mxu0 0.0
  %12038 = vmatprep.subr.mxu0 0.0
  %12039 = vmatpush1.msra.mxu0 %v11965
  %12040 = vmatprep.subr.mxu0 0.0
  %12041 = vmatpush1.msra.mxu0 %v11964
  %12042 = vmatprep.subr.mxu0 0.0
  %12043 = vmatpush1.msra.mxu0 %v11963
  %12044 = vmatprep.subr.mxu0 0.0
  %12045 = vmatpush1.msra.mxu0 %v11962
  %12046 = vmatprep.subr.mxu0 0.0
  %12047 = vmatpush2.msra.mxu0 0.0
  %12048 = vmatprep.subr.mxu0 0.0
  %12049 = vmatpush2.msra.mxu0 0.0
  %12050 = vmatprep.subr.mxu0 0.0
  %12051 = vmatpush2.msra.mxu0 0.0
  %12052 = vmatprep.subr.mxu0 0.0
  %12053 = vmatpush2.msra.mxu0 0.0
  %12054 = vmatprep.subr.mxu0 0.0
  %12055 = vmatpush2.msra.mxu0 0.0
  %12056 = vmatprep.subr.mxu0 0.0
  %12057 = vmatpush2.msra.mxu0 0.0
  %12058 = vmatprep.subr.mxu0 0.0
  %12059 = vmatpush2.msra.mxu0 0.0
  %12060 = vmatprep.subr.mxu0 0.0
  %12061 = vmatpush2.msra.mxu0 0.0
  %12062 = vmatprep.subr.mxu0 0.0
  %12063 = vmatpush2.msra.mxu0 0.0
  %12064 = vmatprep.subr.mxu0 0.0
  %12065 = vmatpush2.msra.mxu0 0.0
  %12066 = vmatprep.subr.mxu0 0.0
  %12067 = vmatpush2.msra.mxu0 0.0
  %12068 = vmatprep.subr.mxu0 0.0
  %12069 = vmatpush2.msra.mxu0 0.0
  %12070 = vmatprep.subr.mxu0 0.0
  %12071 = vmatpush2.msra.mxu0 0.0
  %12072 = vmatprep.subr.mxu0 0.0
  %12073 = vmatpush2.msra.mxu0 0.0
  %12074 = vmatprep.subr.mxu0 0.0
  %12075 = vmatpush2.msra.mxu0 0.0
  %12076 = vmatprep.subr.mxu0 0.0
  %12077 = vmatpush2.msra.mxu0 0.0
  %12078 = vmatprep.mubr.f32.mxu0 0.0
  %12079 = vmatmul.mubr.f32.gmra.mxu0 %v11967
  %v12080 = vpop.f32.mrf.mxu0
  %v12081 = vadd.f32 0.0, %v12080
  %v12082 = vpop.f32.mrf.mxu0
  %12083 = vmatprep.mubr.f32.mxu0 0.0
  %12084 = vmatmul.mubr.f32.gmra.mxu0 %v11970
  %v12085 = vpop.f32.mrf.mxu0
  %v12086 = vadd.f32 0.0, %v12085
  %v12087 = vpop.f32.mrf.mxu0
  %12088 = vmatprep.mubr.f32.mxu0 0.0
  %12089 = vmatmul.mubr.f32.gmra.mxu0 %v11973
  %v12090 = vpop.f32.mrf.mxu0
  %v12091 = vadd.f32 0.0, %v12090
  %v12092 = vpop.f32.mrf.mxu0
  %12093 = vmatprep.mubr.f32.mxu0 0.0
  %12094 = vmatmul.mubr.f32.gmra.mxu0 %v11976
  %v12095 = vpop.f32.mrf.mxu0
  %v12096 = vadd.f32 0.0, %v12095
  %v12097 = vpop.f32.mrf.mxu0
  %12098 = vmatprep.mubr.f32.mxu0 0.0
  %12099 = vmatmul.mubr.f32.gmra.mxu0 %v11979
  %v12100 = vpop.f32.mrf.mxu0
  %v12101 = vadd.f32 0.0, %v12100
  %v12102 = vpop.f32.mrf.mxu0
  %12103 = vmatprep.mubr.f32.mxu0 0.0
  %12104 = vmatmul.mubr.f32.gmra.mxu0 %v11982
  %v12105 = vpop.f32.mrf.mxu0
  %v12106 = vadd.f32 0.0, %v12105
  %v12107 = vpop.f32.mrf.mxu0
  %12108 = vmatprep.mubr.f32.mxu0 0.0
  %12109 = vmatmul.mubr.f32.gmra.mxu0 %v11985
  %v12110 = vpop.f32.mrf.mxu0
  %v12111 = vadd.f32 0.0, %v12110
  %v12112 = vpop.f32.mrf.mxu0
  %12113 = vmatprep.mubr.f32.mxu0 0.0
  %12114 = vmatmul.mubr.f32.gmra.mxu0 %v11988
  %v12115 = vpop.f32.mrf.mxu0
  %v12116 = vadd.f32 0.0, %v12115
  %v12117 = vpop.f32.mrf.mxu0
  %12118 = vmatprep.mubr.f32.mxu0 0.0
  %12119 = vmatmul.mubr.f32.gmra.mxu0 %v11991
  %v12120 = vpop.f32.mrf.mxu0
  %v12121 = vadd.f32 0.0, %v12120
  %v12122 = vpop.f32.mrf.mxu0
  %12123 = vmatprep.mubr.f32.mxu0 0.0
  %12124 = vmatmul.mubr.f32.gmra.mxu0 %v11994
  %v12125 = vpop.f32.mrf.mxu0
  %v12126 = vadd.f32 0.0, %v12125
  %v12127 = vpop.f32.mrf.mxu0
  %12128 = vmatprep.mubr.f32.mxu0 0.0
  %12129 = vmatmul.mubr.f32.gmra.mxu0 %v11997
  %v12130 = vpop.f32.mrf.mxu0
  %v12131 = vadd.f32 0.0, %v12130
  %v12132 = vpop.f32.mrf.mxu0
  %12133 = vmatprep.mubr.f32.mxu0 0.0
  %12134 = vmatmul.mubr.f32.gmra.mxu0 %v12000
  %v12135 = vpop.f32.mrf.mxu0
  %v12136 = vadd.f32 0.0, %v12135
  %v12137 = vpop.f32.mrf.mxu0
  %12138 = vmatprep.mubr.f32.mxu0 0.0
  %12139 = vmatmul.mubr.f32.gmra.mxu0 %v12003
  %v12140 = vpop.f32.mrf.mxu0
  %v12141 = vadd.f32 0.0, %v12140
  %v12142 = vpop.f32.mrf.mxu0
  %12143 = vmatprep.mubr.f32.mxu0 0.0
  %12144 = vmatmul.mubr.f32.gmra.mxu0 %v12006
  %v12145 = vpop.f32.mrf.mxu0
  %v12146 = vadd.f32 0.0, %v12145
  %v12147 = vpop.f32.mrf.mxu0
  %12148 = vmatprep.mubr.f32.mxu0 0.0
  %12149 = vmatmul.mubr.f32.gmra.mxu0 %v12009
  %v12150 = vpop.f32.mrf.mxu0
  %v12151 = vadd.f32 0.0, %v12150
  %v12152 = vpop.f32.mrf.mxu0
  %12153 = vmatprep.mubr.f32.mxu0 0.0
  %12154 = vmatmul.mubr.f32.gmra.mxu0 %v12012
  %v12155 = vpop.f32.mrf.mxu0
  %v12156 = vadd.f32 0.0, %v12155
  %v12157 = vpop.f32.mrf.mxu0
  %12158 = vdwg.mxu0
  %v12159 = vadd.f32 %v11783, %v12081
  %v12160 = vadd.f32 %v11784, %v12086
  %v12161 = vadd.f32 %v11785, %v12091
  %v12162 = vadd.f32 %v11786, %v12096
  %v12163 = vadd.f32 %v11787, %v12101
  %v12164 = vadd.f32 %v11788, %v12106
  %v12165 = vadd.f32 %v11789, %v12111
  %v12166 = vadd.f32 %v11790, %v12116
  %v12167 = vadd.f32 %v11791, %v12121
  %v12168 = vadd.f32 %v11792, %v12126
  %v12169 = vadd.f32 %v11793, %v12131
  %v12170 = vadd.f32 %v11794, %v12136
  %v12171 = vadd.f32 %v11795, %v12141
  %v12172 = vadd.f32 %v11796, %v12146
  %v12173 = vadd.f32 %v11797, %v12151
  %v12174 = vadd.f32 %v11798, %v12156
  %s12175 = scalar_lea.vmem %s1, 1664
  %v12176 = vld [vmem:[%s12175] sm:$0xff]
  %v12177 = vld [vmem:[%s12175 + $0x8] sm:$0xff]
  %v12178 = vld [vmem:[%s12175 + $0x10] sm:$0xff]
  %v12179 = vld [vmem:[%s12175 + $0x18] sm:$0xff]
  %v12180 = vld [vmem:[%s12175 + $0x20] sm:$0xff]
  %v12181 = vld [vmem:[%s12175 + $0x28] sm:$0xff]
  %v12182 = vld [vmem:[%s12175 + $0x30] sm:$0xff]
  %v12183 = vld [vmem:[%s12175 + $0x38] sm:$0xff]
  %v12184 = vld [vmem:[%s12175 + $0x40] sm:$0xff]
  %v12185 = vld [vmem:[%s12175 + $0x48] sm:$0xff]
  %v12186 = vld [vmem:[%s12175 + $0x50] sm:$0xff]
  %v12187 = vld [vmem:[%s12175 + $0x58] sm:$0xff]
  %v12188 = vld [vmem:[%s12175 + $0x60] sm:$0xff]
  %v12189 = vld [vmem:[%s12175 + $0x68] sm:$0xff]
  %v12190 = vld [vmem:[%s12175 + $0x70] sm:$0xff]
  %v12191 = vld [vmem:[%s12175 + $0x78] sm:$0xff]
  %12192 = vmatprep.subr.mxu0 0.0
  %12193 = vmatpush1.msra.mxu0 %v9952
  %12194 = vmatprep.subr.mxu0 0.0
  %12195 = vmatpush1.msra.mxu0 %v9951
  %12196 = vmatprep.subr.mxu0 0.0
  %12197 = vmatpush1.msra.mxu0 %v9950
  %12198 = vmatprep.subr.mxu0 0.0
  %12199 = vmatpush1.msra.mxu0 %v9949
  %12200 = vmatprep.subr.mxu0 0.0
  %12201 = vmatpush1.msra.mxu0 %v9948
  %12202 = vmatprep.subr.mxu0 0.0
  %12203 = vmatpush1.msra.mxu0 %v9947
  %12204 = vmatprep.subr.mxu0 0.0
  %12205 = vmatpush1.msra.mxu0 %v9946
  %12206 = vmatprep.subr.mxu0 0.0
  %12207 = vmatpush1.msra.mxu0 %v9945
  %12208 = vmatprep.subr.mxu0 0.0
  %12209 = vmatpush1.msra.mxu0 %v9944
  %12210 = vmatprep.subr.mxu0 0.0
  %12211 = vmatpush1.msra.mxu0 %v9943
  %12212 = vmatprep.subr.mxu0 0.0
  %12213 = vmatpush1.msra.mxu0 %v9942
  %12214 = vmatprep.subr.mxu0 0.0
  %12215 = vmatpush1.msra.mxu0 %v9941
  %12216 = vmatprep.subr.mxu0 0.0
  %12217 = vmatpush1.msra.mxu0 %v9940
  %12218 = vmatprep.subr.mxu0 0.0
  %12219 = vmatpush1.msra.mxu0 %v9939
  %12220 = vmatprep.subr.mxu0 0.0
  %12221 = vmatpush1.msra.mxu0 %v9938
  %12222 = vmatprep.subr.mxu0 0.0
  %12223 = vmatpush1.msra.mxu0 %v9937
  %12224 = vmatprep.subr.mxu0 0.0
  %12225 = vmatpush2.msra.mxu0 0.0
  %12226 = vmatprep.subr.mxu0 0.0
  %12227 = vmatpush2.msra.mxu0 0.0
  %12228 = vmatprep.subr.mxu0 0.0
  %12229 = vmatpush2.msra.mxu0 0.0
  %12230 = vmatprep.subr.mxu0 0.0
  %12231 = vmatpush2.msra.mxu0 0.0
  %12232 = vmatprep.subr.mxu0 0.0
  %12233 = vmatpush2.msra.mxu0 0.0
  %12234 = vmatprep.subr.mxu0 0.0
  %12235 = vmatpush2.msra.mxu0 0.0
  %12236 = vmatprep.subr.mxu0 0.0
  %12237 = vmatpush2.msra.mxu0 0.0
  %12238 = vmatprep.subr.mxu0 0.0
  %12239 = vmatpush2.msra.mxu0 0.0
  %12240 = vmatprep.subr.mxu0 0.0
  %12241 = vmatpush2.msra.mxu0 0.0
  %12242 = vmatprep.subr.mxu0 0.0
  %12243 = vmatpush2.msra.mxu0 0.0
  %12244 = vmatprep.subr.mxu0 0.0
  %12245 = vmatpush2.msra.mxu0 0.0
  %12246 = vmatprep.subr.mxu0 0.0
  %12247 = vmatpush2.msra.mxu0 0.0
  %12248 = vmatprep.subr.mxu0 0.0
  %12249 = vmatpush2.msra.mxu0 0.0
  %12250 = vmatprep.subr.mxu0 0.0
  %12251 = vmatpush2.msra.mxu0 0.0
  %12252 = vmatprep.subr.mxu0 0.0
  %12253 = vmatpush2.msra.mxu0 0.0
  %12254 = vmatprep.subr.mxu0 0.0
  %12255 = vmatpush2.msra.mxu0 0.0
  %12256 = vmatprep.mubr.f32.mxu0 0.0
  %12257 = vmatmul.mubr.f32.gmra.mxu0 %v12176
  %v12258 = vpop.f32.mrf.mxu0
  %v12259 = vadd.f32 0.0, %v12258
  %v12260 = vpop.f32.mrf.mxu0
  %12261 = vmatprep.mubr.f32.mxu0 0.0
  %12262 = vmatmul.mubr.f32.gmra.mxu0 %v12177
  %v12263 = vpop.f32.mrf.mxu0
  %v12264 = vadd.f32 0.0, %v12263
  %v12265 = vpop.f32.mrf.mxu0
  %12266 = vmatprep.mubr.f32.mxu0 0.0
  %12267 = vmatmul.mubr.f32.gmra.mxu0 %v12178
  %v12268 = vpop.f32.mrf.mxu0
  %v12269 = vadd.f32 0.0, %v12268
  %v12270 = vpop.f32.mrf.mxu0
  %12271 = vmatprep.mubr.f32.mxu0 0.0
  %12272 = vmatmul.mubr.f32.gmra.mxu0 %v12179
  %v12273 = vpop.f32.mrf.mxu0
  %v12274 = vadd.f32 0.0, %v12273
  %v12275 = vpop.f32.mrf.mxu0
  %12276 = vmatprep.mubr.f32.mxu0 0.0
  %12277 = vmatmul.mubr.f32.gmra.mxu0 %v12180
  %v12278 = vpop.f32.mrf.mxu0
  %v12279 = vadd.f32 0.0, %v12278
  %v12280 = vpop.f32.mrf.mxu0
  %12281 = vmatprep.mubr.f32.mxu0 0.0
  %12282 = vmatmul.mubr.f32.gmra.mxu0 %v12181
  %v12283 = vpop.f32.mrf.mxu0
  %v12284 = vadd.f32 0.0, %v12283
  %v12285 = vpop.f32.mrf.mxu0
  %12286 = vmatprep.mubr.f32.mxu0 0.0
  %12287 = vmatmul.mubr.f32.gmra.mxu0 %v12182
  %v12288 = vpop.f32.mrf.mxu0
  %v12289 = vadd.f32 0.0, %v12288
  %v12290 = vpop.f32.mrf.mxu0
  %12291 = vmatprep.mubr.f32.mxu0 0.0
  %12292 = vmatmul.mubr.f32.gmra.mxu0 %v12183
  %v12293 = vpop.f32.mrf.mxu0
  %v12294 = vadd.f32 0.0, %v12293
  %v12295 = vpop.f32.mrf.mxu0
  %12296 = vmatprep.mubr.f32.mxu0 0.0
  %12297 = vmatmul.mubr.f32.gmra.mxu0 %v12184
  %v12298 = vpop.f32.mrf.mxu0
  %v12299 = vadd.f32 0.0, %v12298
  %v12300 = vpop.f32.mrf.mxu0
  %12301 = vmatprep.mubr.f32.mxu0 0.0
  %12302 = vmatmul.mubr.f32.gmra.mxu0 %v12185
  %v12303 = vpop.f32.mrf.mxu0
  %v12304 = vadd.f32 0.0, %v12303
  %v12305 = vpop.f32.mrf.mxu0
  %12306 = vmatprep.mubr.f32.mxu0 0.0
  %12307 = vmatmul.mubr.f32.gmra.mxu0 %v12186
  %v12308 = vpop.f32.mrf.mxu0
  %v12309 = vadd.f32 0.0, %v12308
  %v12310 = vpop.f32.mrf.mxu0
  %12311 = vmatprep.mubr.f32.mxu0 0.0
  %12312 = vmatmul.mubr.f32.gmra.mxu0 %v12187
  %v12313 = vpop.f32.mrf.mxu0
  %v12314 = vadd.f32 0.0, %v12313
  %v12315 = vpop.f32.mrf.mxu0
  %12316 = vmatprep.mubr.f32.mxu0 0.0
  %12317 = vmatmul.mubr.f32.gmra.mxu0 %v12188
  %v12318 = vpop.f32.mrf.mxu0
  %v12319 = vadd.f32 0.0, %v12318
  %v12320 = vpop.f32.mrf.mxu0
  %12321 = vmatprep.mubr.f32.mxu0 0.0
  %12322 = vmatmul.mubr.f32.gmra.mxu0 %v12189
  %v12323 = vpop.f32.mrf.mxu0
  %v12324 = vadd.f32 0.0, %v12323
  %v12325 = vpop.f32.mrf.mxu0
  %12326 = vmatprep.mubr.f32.mxu0 0.0
  %12327 = vmatmul.mubr.f32.gmra.mxu0 %v12190
  %v12328 = vpop.f32.mrf.mxu0
  %v12329 = vadd.f32 0.0, %v12328
  %v12330 = vpop.f32.mrf.mxu0
  %12331 = vmatprep.mubr.f32.mxu0 0.0
  %12332 = vmatmul.mubr.f32.gmra.mxu0 %v12191
  %v12333 = vpop.f32.mrf.mxu0
  %v12334 = vadd.f32 0.0, %v12333
  %v12335 = vpop.f32.mrf.mxu0
  %12336 = vdwg.mxu0
  %s12337 = scalar_lea.vmem %s13, 192
  %v12338 = vld [vmem:[%s12337] sm:$0xff]
  %v12339 = vld [vmem:[%s12337 + $0x8] sm:$0xff]
  %v12340 = vld [vmem:[%s12337 + $0x10] sm:$0xff]
  %v12341 = vld [vmem:[%s12337 + $0x18] sm:$0xff]
  %v12343 = vsel %vm458, %v12259, 0
  %v12346 = vsel %vm458, %v12264, 0
  %v12349 = vsel %vm458, %v12269, 0
  %v12352 = vsel %vm458, %v12274, 0
  %v12355 = vsel %vm458, %v12279, 0
  %v12358 = vsel %vm458, %v12284, 0
  %v12361 = vsel %vm458, %v12289, 0
  %v12364 = vsel %vm458, %v12294, 0
  %v12367 = vsel %vm458, %v12299, 0
  %v12370 = vsel %vm458, %v12304, 0
  %v12373 = vsel %vm458, %v12309, 0
  %v12376 = vsel %vm458, %v12314, 0
  %v12379 = vsel %vm458, %v12319, 0
  %v12382 = vsel %vm458, %v12324, 0
  %v12385 = vsel %vm458, %v12329, 0
  %v12388 = vsel %vm458, %v12334, 0
  %12390 = vmatprep.subr.mxu0 0.0
  %12391 = vmatpush1.msra.mxu0 0.0
  %12392 = vmatprep.subr.mxu0 0.0
  %12393 = vmatpush1.msra.mxu0 0.0
  %12394 = vmatprep.subr.mxu0 0.0
  %12395 = vmatpush1.msra.mxu0 0.0
  %12396 = vmatprep.subr.mxu0 0.0
  %12397 = vmatpush1.msra.mxu0 0.0
  %12398 = vmatprep.subr.mxu0 0.0
  %12399 = vmatpush1.msra.mxu0 0.0
  %12400 = vmatprep.subr.mxu0 0.0
  %12401 = vmatpush1.msra.mxu0 0.0
  %12402 = vmatprep.subr.mxu0 0.0
  %12403 = vmatpush1.msra.mxu0 0.0
  %12404 = vmatprep.subr.mxu0 0.0
  %12405 = vmatpush1.msra.mxu0 0.0
  %12406 = vmatprep.subr.mxu0 0.0
  %12407 = vmatpush1.msra.mxu0 0.0
  %12408 = vmatprep.subr.mxu0 0.0
  %12409 = vmatpush1.msra.mxu0 0.0
  %12410 = vmatprep.subr.mxu0 0.0
  %12411 = vmatpush1.msra.mxu0 0.0
  %12412 = vmatprep.subr.mxu0 0.0
  %12413 = vmatpush1.msra.mxu0 0.0
  %12414 = vmatprep.subr.mxu0 0.0
  %12415 = vmatpush1.msra.mxu0 %v12341
  %12416 = vmatprep.subr.mxu0 0.0
  %12417 = vmatpush1.msra.mxu0 %v12340
  %12418 = vmatprep.subr.mxu0 0.0
  %12419 = vmatpush1.msra.mxu0 %v12339
  %12420 = vmatprep.subr.mxu0 0.0
  %12421 = vmatpush1.msra.mxu0 %v12338
  %12422 = vmatprep.subr.mxu0 0.0
  %12423 = vmatpush2.msra.mxu0 0.0
  %12424 = vmatprep.subr.mxu0 0.0
  %12425 = vmatpush2.msra.mxu0 0.0
  %12426 = vmatprep.subr.mxu0 0.0
  %12427 = vmatpush2.msra.mxu0 0.0
  %12428 = vmatprep.subr.mxu0 0.0
  %12429 = vmatpush2.msra.mxu0 0.0
  %12430 = vmatprep.subr.mxu0 0.0
  %12431 = vmatpush2.msra.mxu0 0.0
  %12432 = vmatprep.subr.mxu0 0.0
  %12433 = vmatpush2.msra.mxu0 0.0
  %12434 = vmatprep.subr.mxu0 0.0
  %12435 = vmatpush2.msra.mxu0 0.0
  %12436 = vmatprep.subr.mxu0 0.0
  %12437 = vmatpush2.msra.mxu0 0.0
  %12438 = vmatprep.subr.mxu0 0.0
  %12439 = vmatpush2.msra.mxu0 0.0
  %12440 = vmatprep.subr.mxu0 0.0
  %12441 = vmatpush2.msra.mxu0 0.0
  %12442 = vmatprep.subr.mxu0 0.0
  %12443 = vmatpush2.msra.mxu0 0.0
  %12444 = vmatprep.subr.mxu0 0.0
  %12445 = vmatpush2.msra.mxu0 0.0
  %12446 = vmatprep.subr.mxu0 0.0
  %12447 = vmatpush2.msra.mxu0 0.0
  %12448 = vmatprep.subr.mxu0 0.0
  %12449 = vmatpush2.msra.mxu0 0.0
  %12450 = vmatprep.subr.mxu0 0.0
  %12451 = vmatpush2.msra.mxu0 0.0
  %12452 = vmatprep.subr.mxu0 0.0
  %12453 = vmatpush2.msra.mxu0 0.0
  %12454 = vmatprep.mubr.f32.mxu0 0.0
  %12455 = vmatmul.mubr.f32.gmra.mxu0 %v12343
  %v12456 = vpop.f32.mrf.mxu0
  %v12457 = vadd.f32 0.0, %v12456
  %v12458 = vpop.f32.mrf.mxu0
  %12459 = vmatprep.mubr.f32.mxu0 0.0
  %12460 = vmatmul.mubr.f32.gmra.mxu0 %v12346
  %v12461 = vpop.f32.mrf.mxu0
  %v12462 = vadd.f32 0.0, %v12461
  %v12463 = vpop.f32.mrf.mxu0
  %12464 = vmatprep.mubr.f32.mxu0 0.0
  %12465 = vmatmul.mubr.f32.gmra.mxu0 %v12349
  %v12466 = vpop.f32.mrf.mxu0
  %v12467 = vadd.f32 0.0, %v12466
  %v12468 = vpop.f32.mrf.mxu0
  %12469 = vmatprep.mubr.f32.mxu0 0.0
  %12470 = vmatmul.mubr.f32.gmra.mxu0 %v12352
  %v12471 = vpop.f32.mrf.mxu0
  %v12472 = vadd.f32 0.0, %v12471
  %v12473 = vpop.f32.mrf.mxu0
  %12474 = vmatprep.mubr.f32.mxu0 0.0
  %12475 = vmatmul.mubr.f32.gmra.mxu0 %v12355
  %v12476 = vpop.f32.mrf.mxu0
  %v12477 = vadd.f32 0.0, %v12476
  %v12478 = vpop.f32.mrf.mxu0
  %12479 = vmatprep.mubr.f32.mxu0 0.0
  %12480 = vmatmul.mubr.f32.gmra.mxu0 %v12358
  %v12481 = vpop.f32.mrf.mxu0
  %v12482 = vadd.f32 0.0, %v12481
  %v12483 = vpop.f32.mrf.mxu0
  %12484 = vmatprep.mubr.f32.mxu0 0.0
  %12485 = vmatmul.mubr.f32.gmra.mxu0 %v12361
  %v12486 = vpop.f32.mrf.mxu0
  %v12487 = vadd.f32 0.0, %v12486
  %v12488 = vpop.f32.mrf.mxu0
  %12489 = vmatprep.mubr.f32.mxu0 0.0
  %12490 = vmatmul.mubr.f32.gmra.mxu0 %v12364
  %v12491 = vpop.f32.mrf.mxu0
  %v12492 = vadd.f32 0.0, %v12491
  %v12493 = vpop.f32.mrf.mxu0
  %12494 = vmatprep.mubr.f32.mxu0 0.0
  %12495 = vmatmul.mubr.f32.gmra.mxu0 %v12367
  %v12496 = vpop.f32.mrf.mxu0
  %v12497 = vadd.f32 0.0, %v12496
  %v12498 = vpop.f32.mrf.mxu0
  %12499 = vmatprep.mubr.f32.mxu0 0.0
  %12500 = vmatmul.mubr.f32.gmra.mxu0 %v12370
  %v12501 = vpop.f32.mrf.mxu0
  %v12502 = vadd.f32 0.0, %v12501
  %v12503 = vpop.f32.mrf.mxu0
  %12504 = vmatprep.mubr.f32.mxu0 0.0
  %12505 = vmatmul.mubr.f32.gmra.mxu0 %v12373
  %v12506 = vpop.f32.mrf.mxu0
  %v12507 = vadd.f32 0.0, %v12506
  %v12508 = vpop.f32.mrf.mxu0
  %12509 = vmatprep.mubr.f32.mxu0 0.0
  %12510 = vmatmul.mubr.f32.gmra.mxu0 %v12376
  %v12511 = vpop.f32.mrf.mxu0
  %v12512 = vadd.f32 0.0, %v12511
  %v12513 = vpop.f32.mrf.mxu0
  %12514 = vmatprep.mubr.f32.mxu0 0.0
  %12515 = vmatmul.mubr.f32.gmra.mxu0 %v12379
  %v12516 = vpop.f32.mrf.mxu0
  %v12517 = vadd.f32 0.0, %v12516
  %v12518 = vpop.f32.mrf.mxu0
  %12519 = vmatprep.mubr.f32.mxu0 0.0
  %12520 = vmatmul.mubr.f32.gmra.mxu0 %v12382
  %v12521 = vpop.f32.mrf.mxu0
  %v12522 = vadd.f32 0.0, %v12521
  %v12523 = vpop.f32.mrf.mxu0
  %12524 = vmatprep.mubr.f32.mxu0 0.0
  %12525 = vmatmul.mubr.f32.gmra.mxu0 %v12385
  %v12526 = vpop.f32.mrf.mxu0
  %v12527 = vadd.f32 0.0, %v12526
  %v12528 = vpop.f32.mrf.mxu0
  %12529 = vmatprep.mubr.f32.mxu0 0.0
  %12530 = vmatmul.mubr.f32.gmra.mxu0 %v12388
  %v12531 = vpop.f32.mrf.mxu0
  %v12532 = vadd.f32 0.0, %v12531
  %v12533 = vpop.f32.mrf.mxu0
  %12534 = vdwg.mxu0
  %v12535 = vadd.f32 %v12159, %v12457
  %v12536 = vadd.f32 %v12160, %v12462
  %v12537 = vadd.f32 %v12161, %v12467
  %v12538 = vadd.f32 %v12162, %v12472
  %v12539 = vadd.f32 %v12163, %v12477
  %v12540 = vadd.f32 %v12164, %v12482
  %v12541 = vadd.f32 %v12165, %v12487
  %v12542 = vadd.f32 %v12166, %v12492
  %v12543 = vadd.f32 %v12167, %v12497
  %v12544 = vadd.f32 %v12168, %v12502
  %v12545 = vadd.f32 %v12169, %v12507
  %v12546 = vadd.f32 %v12170, %v12512
  %v12547 = vadd.f32 %v12171, %v12517
  %v12548 = vadd.f32 %v12172, %v12522
  %v12549 = vadd.f32 %v12173, %v12527
  %v12550 = vadd.f32 %v12174, %v12532
  %s12551 = scalar_lea.vmem %s1, 1792
  %v12552 = vld [vmem:[%s12551] sm:$0xff]
  %v12553 = vld [vmem:[%s12551 + $0x8] sm:$0xff]
  %v12554 = vld [vmem:[%s12551 + $0x10] sm:$0xff]
  %v12555 = vld [vmem:[%s12551 + $0x18] sm:$0xff]
  %v12556 = vld [vmem:[%s12551 + $0x20] sm:$0xff]
  %v12557 = vld [vmem:[%s12551 + $0x28] sm:$0xff]
  %v12558 = vld [vmem:[%s12551 + $0x30] sm:$0xff]
  %v12559 = vld [vmem:[%s12551 + $0x38] sm:$0xff]
  %v12560 = vld [vmem:[%s12551 + $0x40] sm:$0xff]
  %v12561 = vld [vmem:[%s12551 + $0x48] sm:$0xff]
  %v12562 = vld [vmem:[%s12551 + $0x50] sm:$0xff]
  %v12563 = vld [vmem:[%s12551 + $0x58] sm:$0xff]
  %v12564 = vld [vmem:[%s12551 + $0x60] sm:$0xff]
  %v12565 = vld [vmem:[%s12551 + $0x68] sm:$0xff]
  %v12566 = vld [vmem:[%s12551 + $0x70] sm:$0xff]
  %v12567 = vld [vmem:[%s12551 + $0x78] sm:$0xff]
  %12568 = vmatprep.subr.mxu0 0.0
  %12569 = vmatpush1.msra.mxu0 %v9952
  %12570 = vmatprep.subr.mxu0 0.0
  %12571 = vmatpush1.msra.mxu0 %v9951
  %12572 = vmatprep.subr.mxu0 0.0
  %12573 = vmatpush1.msra.mxu0 %v9950
  %12574 = vmatprep.subr.mxu0 0.0
  %12575 = vmatpush1.msra.mxu0 %v9949
  %12576 = vmatprep.subr.mxu0 0.0
  %12577 = vmatpush1.msra.mxu0 %v9948
  %12578 = vmatprep.subr.mxu0 0.0
  %12579 = vmatpush1.msra.mxu0 %v9947
  %12580 = vmatprep.subr.mxu0 0.0
  %12581 = vmatpush1.msra.mxu0 %v9946
  %12582 = vmatprep.subr.mxu0 0.0
  %12583 = vmatpush1.msra.mxu0 %v9945
  %12584 = vmatprep.subr.mxu0 0.0
  %12585 = vmatpush1.msra.mxu0 %v9944
  %12586 = vmatprep.subr.mxu0 0.0
  %12587 = vmatpush1.msra.mxu0 %v9943
  %12588 = vmatprep.subr.mxu0 0.0
  %12589 = vmatpush1.msra.mxu0 %v9942
  %12590 = vmatprep.subr.mxu0 0.0
  %12591 = vmatpush1.msra.mxu0 %v9941
  %12592 = vmatprep.subr.mxu0 0.0
  %12593 = vmatpush1.msra.mxu0 %v9940
  %12594 = vmatprep.subr.mxu0 0.0
  %12595 = vmatpush1.msra.mxu0 %v9939
  %12596 = vmatprep.subr.mxu0 0.0
  %12597 = vmatpush1.msra.mxu0 %v9938
  %12598 = vmatprep.subr.mxu0 0.0
  %12599 = vmatpush1.msra.mxu0 %v9937
  %12600 = vmatprep.subr.mxu0 0.0
  %12601 = vmatpush2.msra.mxu0 0.0
  %12602 = vmatprep.subr.mxu0 0.0
  %12603 = vmatpush2.msra.mxu0 0.0
  %12604 = vmatprep.subr.mxu0 0.0
  %12605 = vmatpush2.msra.mxu0 0.0
  %12606 = vmatprep.subr.mxu0 0.0
  %12607 = vmatpush2.msra.mxu0 0.0
  %12608 = vmatprep.subr.mxu0 0.0
  %12609 = vmatpush2.msra.mxu0 0.0
  %12610 = vmatprep.subr.mxu0 0.0
  %12611 = vmatpush2.msra.mxu0 0.0
  %12612 = vmatprep.subr.mxu0 0.0
  %12613 = vmatpush2.msra.mxu0 0.0
  %12614 = vmatprep.subr.mxu0 0.0
  %12615 = vmatpush2.msra.mxu0 0.0
  %12616 = vmatprep.subr.mxu0 0.0
  %12617 = vmatpush2.msra.mxu0 0.0
  %12618 = vmatprep.subr.mxu0 0.0
  %12619 = vmatpush2.msra.mxu0 0.0
  %12620 = vmatprep.subr.mxu0 0.0
  %12621 = vmatpush2.msra.mxu0 0.0
  %12622 = vmatprep.subr.mxu0 0.0
  %12623 = vmatpush2.msra.mxu0 0.0
  %12624 = vmatprep.subr.mxu0 0.0
  %12625 = vmatpush2.msra.mxu0 0.0
  %12626 = vmatprep.subr.mxu0 0.0
  %12627 = vmatpush2.msra.mxu0 0.0
  %12628 = vmatprep.subr.mxu0 0.0
  %12629 = vmatpush2.msra.mxu0 0.0
  %12630 = vmatprep.subr.mxu0 0.0
  %12631 = vmatpush2.msra.mxu0 0.0
  %12632 = vmatprep.mubr.f32.mxu0 0.0
  %12633 = vmatmul.mubr.f32.gmra.mxu0 %v12552
  %v12634 = vpop.f32.mrf.mxu0
  %v12635 = vadd.f32 0.0, %v12634
  %v12636 = vpop.f32.mrf.mxu0
  %12637 = vmatprep.mubr.f32.mxu0 0.0
  %12638 = vmatmul.mubr.f32.gmra.mxu0 %v12553
  %v12639 = vpop.f32.mrf.mxu0
  %v12640 = vadd.f32 0.0, %v12639
  %v12641 = vpop.f32.mrf.mxu0
  %12642 = vmatprep.mubr.f32.mxu0 0.0
  %12643 = vmatmul.mubr.f32.gmra.mxu0 %v12554
  %v12644 = vpop.f32.mrf.mxu0
  %v12645 = vadd.f32 0.0, %v12644
  %v12646 = vpop.f32.mrf.mxu0
  %12647 = vmatprep.mubr.f32.mxu0 0.0
  %12648 = vmatmul.mubr.f32.gmra.mxu0 %v12555
  %v12649 = vpop.f32.mrf.mxu0
  %v12650 = vadd.f32 0.0, %v12649
  %v12651 = vpop.f32.mrf.mxu0
  %12652 = vmatprep.mubr.f32.mxu0 0.0
  %12653 = vmatmul.mubr.f32.gmra.mxu0 %v12556
  %v12654 = vpop.f32.mrf.mxu0
  %v12655 = vadd.f32 0.0, %v12654
  %v12656 = vpop.f32.mrf.mxu0
  %12657 = vmatprep.mubr.f32.mxu0 0.0
  %12658 = vmatmul.mubr.f32.gmra.mxu0 %v12557
  %v12659 = vpop.f32.mrf.mxu0
  %v12660 = vadd.f32 0.0, %v12659
  %v12661 = vpop.f32.mrf.mxu0
  %12662 = vmatprep.mubr.f32.mxu0 0.0
  %12663 = vmatmul.mubr.f32.gmra.mxu0 %v12558
  %v12664 = vpop.f32.mrf.mxu0
  %v12665 = vadd.f32 0.0, %v12664
  %v12666 = vpop.f32.mrf.mxu0
  %12667 = vmatprep.mubr.f32.mxu0 0.0
  %12668 = vmatmul.mubr.f32.gmra.mxu0 %v12559
  %v12669 = vpop.f32.mrf.mxu0
  %v12670 = vadd.f32 0.0, %v12669
  %v12671 = vpop.f32.mrf.mxu0
  %12672 = vmatprep.mubr.f32.mxu0 0.0
  %12673 = vmatmul.mubr.f32.gmra.mxu0 %v12560
  %v12674 = vpop.f32.mrf.mxu0
  %v12675 = vadd.f32 0.0, %v12674
  %v12676 = vpop.f32.mrf.mxu0
  %12677 = vmatprep.mubr.f32.mxu0 0.0
  %12678 = vmatmul.mubr.f32.gmra.mxu0 %v12561
  %v12679 = vpop.f32.mrf.mxu0
  %v12680 = vadd.f32 0.0, %v12679
  %v12681 = vpop.f32.mrf.mxu0
  %12682 = vmatprep.mubr.f32.mxu0 0.0
  %12683 = vmatmul.mubr.f32.gmra.mxu0 %v12562
  %v12684 = vpop.f32.mrf.mxu0
  %v12685 = vadd.f32 0.0, %v12684
  %v12686 = vpop.f32.mrf.mxu0
  %12687 = vmatprep.mubr.f32.mxu0 0.0
  %12688 = vmatmul.mubr.f32.gmra.mxu0 %v12563
  %v12689 = vpop.f32.mrf.mxu0
  %v12690 = vadd.f32 0.0, %v12689
  %v12691 = vpop.f32.mrf.mxu0
  %12692 = vmatprep.mubr.f32.mxu0 0.0
  %12693 = vmatmul.mubr.f32.gmra.mxu0 %v12564
  %v12694 = vpop.f32.mrf.mxu0
  %v12695 = vadd.f32 0.0, %v12694
  %v12696 = vpop.f32.mrf.mxu0
  %12697 = vmatprep.mubr.f32.mxu0 0.0
  %12698 = vmatmul.mubr.f32.gmra.mxu0 %v12565
  %v12699 = vpop.f32.mrf.mxu0
  %v12700 = vadd.f32 0.0, %v12699
  %v12701 = vpop.f32.mrf.mxu0
  %12702 = vmatprep.mubr.f32.mxu0 0.0
  %12703 = vmatmul.mubr.f32.gmra.mxu0 %v12566
  %v12704 = vpop.f32.mrf.mxu0
  %v12705 = vadd.f32 0.0, %v12704
  %v12706 = vpop.f32.mrf.mxu0
  %12707 = vmatprep.mubr.f32.mxu0 0.0
  %12708 = vmatmul.mubr.f32.gmra.mxu0 %v12567
  %v12709 = vpop.f32.mrf.mxu0
  %v12710 = vadd.f32 0.0, %v12709
  %v12711 = vpop.f32.mrf.mxu0
  %12712 = vdwg.mxu0
  %s12713 = scalar_lea.vmem %s13, 224
  %v12714 = vld [vmem:[%s12713] sm:$0xff]
  %v12715 = vld [vmem:[%s12713 + $0x8] sm:$0xff]
  %v12716 = vld [vmem:[%s12713 + $0x10] sm:$0xff]
  %v12717 = vld [vmem:[%s12713 + $0x18] sm:$0xff]
  %v12719 = vsel %vm458, %v12635, 0
  %v12722 = vsel %vm458, %v12640, 0
  %v12725 = vsel %vm458, %v12645, 0
  %v12728 = vsel %vm458, %v12650, 0
  %v12731 = vsel %vm458, %v12655, 0
  %v12734 = vsel %vm458, %v12660, 0
  %v12737 = vsel %vm458, %v12665, 0
  %v12740 = vsel %vm458, %v12670, 0
  %v12743 = vsel %vm458, %v12675, 0
  %v12746 = vsel %vm458, %v12680, 0
  %v12749 = vsel %vm458, %v12685, 0
  %v12752 = vsel %vm458, %v12690, 0
  %v12755 = vsel %vm458, %v12695, 0
  %v12758 = vsel %vm458, %v12700, 0
  %v12761 = vsel %vm458, %v12705, 0
  %v12764 = vsel %vm458, %v12710, 0
  %12766 = vmatprep.subr.mxu0 0.0
  %12767 = vmatpush1.msra.mxu0 0.0
  %12768 = vmatprep.subr.mxu0 0.0
  %12769 = vmatpush1.msra.mxu0 0.0
  %12770 = vmatprep.subr.mxu0 0.0
  %12771 = vmatpush1.msra.mxu0 0.0
  %12772 = vmatprep.subr.mxu0 0.0
  %12773 = vmatpush1.msra.mxu0 0.0
  %12774 = vmatprep.subr.mxu0 0.0
  %12775 = vmatpush1.msra.mxu0 0.0
  %12776 = vmatprep.subr.mxu0 0.0
  %12777 = vmatpush1.msra.mxu0 0.0
  %12778 = vmatprep.subr.mxu0 0.0
  %12779 = vmatpush1.msra.mxu0 0.0
  %12780 = vmatprep.subr.mxu0 0.0
  %12781 = vmatpush1.msra.mxu0 0.0
  %12782 = vmatprep.subr.mxu0 0.0
  %12783 = vmatpush1.msra.mxu0 0.0
  %12784 = vmatprep.subr.mxu0 0.0
  %12785 = vmatpush1.msra.mxu0 0.0
  %12786 = vmatprep.subr.mxu0 0.0
  %12787 = vmatpush1.msra.mxu0 0.0
  %12788 = vmatprep.subr.mxu0 0.0
  %12789 = vmatpush1.msra.mxu0 0.0
  %12790 = vmatprep.subr.mxu0 0.0
  %12791 = vmatpush1.msra.mxu0 %v12717
  %12792 = vmatprep.subr.mxu0 0.0
  %12793 = vmatpush1.msra.mxu0 %v12716
  %12794 = vmatprep.subr.mxu0 0.0
  %12795 = vmatpush1.msra.mxu0 %v12715
  %12796 = vmatprep.subr.mxu0 0.0
  %12797 = vmatpush1.msra.mxu0 %v12714
  %12798 = vmatprep.subr.mxu0 0.0
  %12799 = vmatpush2.msra.mxu0 0.0
  %12800 = vmatprep.subr.mxu0 0.0
  %12801 = vmatpush2.msra.mxu0 0.0
  %12802 = vmatprep.subr.mxu0 0.0
  %12803 = vmatpush2.msra.mxu0 0.0
  %12804 = vmatprep.subr.mxu0 0.0
  %12805 = vmatpush2.msra.mxu0 0.0
  %12806 = vmatprep.subr.mxu0 0.0
  %12807 = vmatpush2.msra.mxu0 0.0
  %12808 = vmatprep.subr.mxu0 0.0
  %12809 = vmatpush2.msra.mxu0 0.0
  %12810 = vmatprep.subr.mxu0 0.0
  %12811 = vmatpush2.msra.mxu0 0.0
  %12812 = vmatprep.subr.mxu0 0.0
  %12813 = vmatpush2.msra.mxu0 0.0
  %12814 = vmatprep.subr.mxu0 0.0
  %12815 = vmatpush2.msra.mxu0 0.0
  %12816 = vmatprep.subr.mxu0 0.0
  %12817 = vmatpush2.msra.mxu0 0.0
  %12818 = vmatprep.subr.mxu0 0.0
  %12819 = vmatpush2.msra.mxu0 0.0
  %12820 = vmatprep.subr.mxu0 0.0
  %12821 = vmatpush2.msra.mxu0 0.0
  %12822 = vmatprep.subr.mxu0 0.0
  %12823 = vmatpush2.msra.mxu0 0.0
  %12824 = vmatprep.subr.mxu0 0.0
  %12825 = vmatpush2.msra.mxu0 0.0
  %12826 = vmatprep.subr.mxu0 0.0
  %12827 = vmatpush2.msra.mxu0 0.0
  %12828 = vmatprep.subr.mxu0 0.0
  %12829 = vmatpush2.msra.mxu0 0.0
  %12830 = vmatprep.mubr.f32.mxu0 0.0
  %12831 = vmatmul.mubr.f32.gmra.mxu0 %v12719
  %v12832 = vpop.f32.mrf.mxu0
  %v12833 = vadd.f32 0.0, %v12832
  %v12834 = vpop.f32.mrf.mxu0
  %12835 = vmatprep.mubr.f32.mxu0 0.0
  %12836 = vmatmul.mubr.f32.gmra.mxu0 %v12722
  %v12837 = vpop.f32.mrf.mxu0
  %v12838 = vadd.f32 0.0, %v12837
  %v12839 = vpop.f32.mrf.mxu0
  %12840 = vmatprep.mubr.f32.mxu0 0.0
  %12841 = vmatmul.mubr.f32.gmra.mxu0 %v12725
  %v12842 = vpop.f32.mrf.mxu0
  %v12843 = vadd.f32 0.0, %v12842
  %v12844 = vpop.f32.mrf.mxu0
  %12845 = vmatprep.mubr.f32.mxu0 0.0
  %12846 = vmatmul.mubr.f32.gmra.mxu0 %v12728
  %v12847 = vpop.f32.mrf.mxu0
  %v12848 = vadd.f32 0.0, %v12847
  %v12849 = vpop.f32.mrf.mxu0
  %12850 = vmatprep.mubr.f32.mxu0 0.0
  %12851 = vmatmul.mubr.f32.gmra.mxu0 %v12731
  %v12852 = vpop.f32.mrf.mxu0
  %v12853 = vadd.f32 0.0, %v12852
  %v12854 = vpop.f32.mrf.mxu0
  %12855 = vmatprep.mubr.f32.mxu0 0.0
  %12856 = vmatmul.mubr.f32.gmra.mxu0 %v12734
  %v12857 = vpop.f32.mrf.mxu0
  %v12858 = vadd.f32 0.0, %v12857
  %v12859 = vpop.f32.mrf.mxu0
  %12860 = vmatprep.mubr.f32.mxu0 0.0
  %12861 = vmatmul.mubr.f32.gmra.mxu0 %v12737
  %v12862 = vpop.f32.mrf.mxu0
  %v12863 = vadd.f32 0.0, %v12862
  %v12864 = vpop.f32.mrf.mxu0
  %12865 = vmatprep.mubr.f32.mxu0 0.0
  %12866 = vmatmul.mubr.f32.gmra.mxu0 %v12740
  %v12867 = vpop.f32.mrf.mxu0
  %v12868 = vadd.f32 0.0, %v12867
  %v12869 = vpop.f32.mrf.mxu0
  %12870 = vmatprep.mubr.f32.mxu0 0.0
  %12871 = vmatmul.mubr.f32.gmra.mxu0 %v12743
  %v12872 = vpop.f32.mrf.mxu0
  %v12873 = vadd.f32 0.0, %v12872
  %v12874 = vpop.f32.mrf.mxu0
  %12875 = vmatprep.mubr.f32.mxu0 0.0
  %12876 = vmatmul.mubr.f32.gmra.mxu0 %v12746
  %v12877 = vpop.f32.mrf.mxu0
  %v12878 = vadd.f32 0.0, %v12877
  %v12879 = vpop.f32.mrf.mxu0
  %12880 = vmatprep.mubr.f32.mxu0 0.0
  %12881 = vmatmul.mubr.f32.gmra.mxu0 %v12749
  %v12882 = vpop.f32.mrf.mxu0
  %v12883 = vadd.f32 0.0, %v12882
  %v12884 = vpop.f32.mrf.mxu0
  %12885 = vmatprep.mubr.f32.mxu0 0.0
  %12886 = vmatmul.mubr.f32.gmra.mxu0 %v12752
  %v12887 = vpop.f32.mrf.mxu0
  %v12888 = vadd.f32 0.0, %v12887
  %v12889 = vpop.f32.mrf.mxu0
  %12890 = vmatprep.mubr.f32.mxu0 0.0
  %12891 = vmatmul.mubr.f32.gmra.mxu0 %v12755
  %v12892 = vpop.f32.mrf.mxu0
  %v12893 = vadd.f32 0.0, %v12892
  %v12894 = vpop.f32.mrf.mxu0
  %12895 = vmatprep.mubr.f32.mxu0 0.0
  %12896 = vmatmul.mubr.f32.gmra.mxu0 %v12758
  %v12897 = vpop.f32.mrf.mxu0
  %v12898 = vadd.f32 0.0, %v12897
  %v12899 = vpop.f32.mrf.mxu0
  %12900 = vmatprep.mubr.f32.mxu0 0.0
  %12901 = vmatmul.mubr.f32.gmra.mxu0 %v12761
  %v12902 = vpop.f32.mrf.mxu0
  %v12903 = vadd.f32 0.0, %v12902
  %v12904 = vpop.f32.mrf.mxu0
  %12905 = vmatprep.mubr.f32.mxu0 0.0
  %12906 = vmatmul.mubr.f32.gmra.mxu0 %v12764
  %v12907 = vpop.f32.mrf.mxu0
  %v12908 = vadd.f32 0.0, %v12907
  %v12909 = vpop.f32.mrf.mxu0
  %12910 = vdwg.mxu0
  %v12911 = vadd.f32 %v12535, %v12833
  %v12912 = vadd.f32 %v12536, %v12838
  %v12913 = vadd.f32 %v12537, %v12843
  %v12914 = vadd.f32 %v12538, %v12848
  %v12915 = vadd.f32 %v12539, %v12853
  %v12916 = vadd.f32 %v12540, %v12858
  %v12917 = vadd.f32 %v12541, %v12863
  %v12918 = vadd.f32 %v12542, %v12868
  %v12919 = vadd.f32 %v12543, %v12873
  %v12920 = vadd.f32 %v12544, %v12878
  %v12921 = vadd.f32 %v12545, %v12883
  %v12922 = vadd.f32 %v12546, %v12888
  %v12923 = vadd.f32 %v12547, %v12893
  %v12924 = vadd.f32 %v12548, %v12898
  %v12925 = vadd.f32 %v12549, %v12903
  %v12926 = vadd.f32 %v12550, %v12908
  %s12927 = scalar_lea.vmem %s1, 1920
  %v12928 = vld [vmem:[%s12927] sm:$0xff]
  %v12929 = vld [vmem:[%s12927 + $0x8] sm:$0xff]
  %v12930 = vld [vmem:[%s12927 + $0x10] sm:$0xff]
  %v12931 = vld [vmem:[%s12927 + $0x18] sm:$0xff]
  %v12932 = vld [vmem:[%s12927 + $0x20] sm:$0xff]
  %v12933 = vld [vmem:[%s12927 + $0x28] sm:$0xff]
  %v12934 = vld [vmem:[%s12927 + $0x30] sm:$0xff]
  %v12935 = vld [vmem:[%s12927 + $0x38] sm:$0xff]
  %v12936 = vld [vmem:[%s12927 + $0x40] sm:$0xff]
  %v12937 = vld [vmem:[%s12927 + $0x48] sm:$0xff]
  %v12938 = vld [vmem:[%s12927 + $0x50] sm:$0xff]
  %v12939 = vld [vmem:[%s12927 + $0x58] sm:$0xff]
  %v12940 = vld [vmem:[%s12927 + $0x60] sm:$0xff]
  %v12941 = vld [vmem:[%s12927 + $0x68] sm:$0xff]
  %v12942 = vld [vmem:[%s12927 + $0x70] sm:$0xff]
  %v12943 = vld [vmem:[%s12927 + $0x78] sm:$0xff]
  %12944 = vmatprep.subr.mxu0 0.0
  %12945 = vmatpush1.msra.mxu0 %v9952
  %12946 = vmatprep.subr.mxu0 0.0
  %12947 = vmatpush1.msra.mxu0 %v9951
  %12948 = vmatprep.subr.mxu0 0.0
  %12949 = vmatpush1.msra.mxu0 %v9950
  %12950 = vmatprep.subr.mxu0 0.0
  %12951 = vmatpush1.msra.mxu0 %v9949
  %12952 = vmatprep.subr.mxu0 0.0
  %12953 = vmatpush1.msra.mxu0 %v9948
  %12954 = vmatprep.subr.mxu0 0.0
  %12955 = vmatpush1.msra.mxu0 %v9947
  %12956 = vmatprep.subr.mxu0 0.0
  %12957 = vmatpush1.msra.mxu0 %v9946
  %12958 = vmatprep.subr.mxu0 0.0
  %12959 = vmatpush1.msra.mxu0 %v9945
  %12960 = vmatprep.subr.mxu0 0.0
  %12961 = vmatpush1.msra.mxu0 %v9944
  %12962 = vmatprep.subr.mxu0 0.0
  %12963 = vmatpush1.msra.mxu0 %v9943
  %12964 = vmatprep.subr.mxu0 0.0
  %12965 = vmatpush1.msra.mxu0 %v9942
  %12966 = vmatprep.subr.mxu0 0.0
  %12967 = vmatpush1.msra.mxu0 %v9941
  %12968 = vmatprep.subr.mxu0 0.0
  %12969 = vmatpush1.msra.mxu0 %v9940
  %12970 = vmatprep.subr.mxu0 0.0
  %12971 = vmatpush1.msra.mxu0 %v9939
  %12972 = vmatprep.subr.mxu0 0.0
  %12973 = vmatpush1.msra.mxu0 %v9938
  %12974 = vmatprep.subr.mxu0 0.0
  %12975 = vmatpush1.msra.mxu0 %v9937
  %12976 = vmatprep.subr.mxu0 0.0
  %12977 = vmatpush2.msra.mxu0 0.0
  %12978 = vmatprep.subr.mxu0 0.0
  %12979 = vmatpush2.msra.mxu0 0.0
  %12980 = vmatprep.subr.mxu0 0.0
  %12981 = vmatpush2.msra.mxu0 0.0
  %12982 = vmatprep.subr.mxu0 0.0
  %12983 = vmatpush2.msra.mxu0 0.0
  %12984 = vmatprep.subr.mxu0 0.0
  %12985 = vmatpush2.msra.mxu0 0.0
  %12986 = vmatprep.subr.mxu0 0.0
  %12987 = vmatpush2.msra.mxu0 0.0
  %12988 = vmatprep.subr.mxu0 0.0
  %12989 = vmatpush2.msra.mxu0 0.0
  %12990 = vmatprep.subr.mxu0 0.0
  %12991 = vmatpush2.msra.mxu0 0.0
  %12992 = vmatprep.subr.mxu0 0.0
  %12993 = vmatpush2.msra.mxu0 0.0
  %12994 = vmatprep.subr.mxu0 0.0
  %12995 = vmatpush2.msra.mxu0 0.0
  %12996 = vmatprep.subr.mxu0 0.0
  %12997 = vmatpush2.msra.mxu0 0.0
  %12998 = vmatprep.subr.mxu0 0.0
  %12999 = vmatpush2.msra.mxu0 0.0
  %13000 = vmatprep.subr.mxu0 0.0
  %13001 = vmatpush2.msra.mxu0 0.0
  %13002 = vmatprep.subr.mxu0 0.0
  %13003 = vmatpush2.msra.mxu0 0.0
  %13004 = vmatprep.subr.mxu0 0.0
  %13005 = vmatpush2.msra.mxu0 0.0
  %13006 = vmatprep.subr.mxu0 0.0
  %13007 = vmatpush2.msra.mxu0 0.0
  %13008 = vmatprep.mubr.f32.mxu0 0.0
  %13009 = vmatmul.mubr.f32.gmra.mxu0 %v12928
  %v13010 = vpop.f32.mrf.mxu0
  %v13011 = vadd.f32 0.0, %v13010
  %v13012 = vpop.f32.mrf.mxu0
  %13013 = vmatprep.mubr.f32.mxu0 0.0
  %13014 = vmatmul.mubr.f32.gmra.mxu0 %v12929
  %v13015 = vpop.f32.mrf.mxu0
  %v13016 = vadd.f32 0.0, %v13015
  %v13017 = vpop.f32.mrf.mxu0
  %13018 = vmatprep.mubr.f32.mxu0 0.0
  %13019 = vmatmul.mubr.f32.gmra.mxu0 %v12930
  %v13020 = vpop.f32.mrf.mxu0
  %v13021 = vadd.f32 0.0, %v13020
  %v13022 = vpop.f32.mrf.mxu0
  %13023 = vmatprep.mubr.f32.mxu0 0.0
  %13024 = vmatmul.mubr.f32.gmra.mxu0 %v12931
  %v13025 = vpop.f32.mrf.mxu0
  %v13026 = vadd.f32 0.0, %v13025
  %v13027 = vpop.f32.mrf.mxu0
  %13028 = vmatprep.mubr.f32.mxu0 0.0
  %13029 = vmatmul.mubr.f32.gmra.mxu0 %v12932
  %v13030 = vpop.f32.mrf.mxu0
  %v13031 = vadd.f32 0.0, %v13030
  %v13032 = vpop.f32.mrf.mxu0
  %13033 = vmatprep.mubr.f32.mxu0 0.0
  %13034 = vmatmul.mubr.f32.gmra.mxu0 %v12933
  %v13035 = vpop.f32.mrf.mxu0
  %v13036 = vadd.f32 0.0, %v13035
  %v13037 = vpop.f32.mrf.mxu0
  %13038 = vmatprep.mubr.f32.mxu0 0.0
  %13039 = vmatmul.mubr.f32.gmra.mxu0 %v12934
  %v13040 = vpop.f32.mrf.mxu0
  %v13041 = vadd.f32 0.0, %v13040
  %v13042 = vpop.f32.mrf.mxu0
  %13043 = vmatprep.mubr.f32.mxu0 0.0
  %13044 = vmatmul.mubr.f32.gmra.mxu0 %v12935
  %v13045 = vpop.f32.mrf.mxu0
  %v13046 = vadd.f32 0.0, %v13045
  %v13047 = vpop.f32.mrf.mxu0
  %13048 = vmatprep.mubr.f32.mxu0 0.0
  %13049 = vmatmul.mubr.f32.gmra.mxu0 %v12936
  %v13050 = vpop.f32.mrf.mxu0
  %v13051 = vadd.f32 0.0, %v13050
  %v13052 = vpop.f32.mrf.mxu0
  %13053 = vmatprep.mubr.f32.mxu0 0.0
  %13054 = vmatmul.mubr.f32.gmra.mxu0 %v12937
  %v13055 = vpop.f32.mrf.mxu0
  %v13056 = vadd.f32 0.0, %v13055
  %v13057 = vpop.f32.mrf.mxu0
  %13058 = vmatprep.mubr.f32.mxu0 0.0
  %13059 = vmatmul.mubr.f32.gmra.mxu0 %v12938
  %v13060 = vpop.f32.mrf.mxu0
  %v13061 = vadd.f32 0.0, %v13060
  %v13062 = vpop.f32.mrf.mxu0
  %13063 = vmatprep.mubr.f32.mxu0 0.0
  %13064 = vmatmul.mubr.f32.gmra.mxu0 %v12939
  %v13065 = vpop.f32.mrf.mxu0
  %v13066 = vadd.f32 0.0, %v13065
  %v13067 = vpop.f32.mrf.mxu0
  %13068 = vmatprep.mubr.f32.mxu0 0.0
  %13069 = vmatmul.mubr.f32.gmra.mxu0 %v12940
  %v13070 = vpop.f32.mrf.mxu0
  %v13071 = vadd.f32 0.0, %v13070
  %v13072 = vpop.f32.mrf.mxu0
  %13073 = vmatprep.mubr.f32.mxu0 0.0
  %13074 = vmatmul.mubr.f32.gmra.mxu0 %v12941
  %v13075 = vpop.f32.mrf.mxu0
  %v13076 = vadd.f32 0.0, %v13075
  %v13077 = vpop.f32.mrf.mxu0
  %13078 = vmatprep.mubr.f32.mxu0 0.0
  %13079 = vmatmul.mubr.f32.gmra.mxu0 %v12942
  %v13080 = vpop.f32.mrf.mxu0
  %v13081 = vadd.f32 0.0, %v13080
  %v13082 = vpop.f32.mrf.mxu0
  %13083 = vmatprep.mubr.f32.mxu0 0.0
  %13084 = vmatmul.mubr.f32.gmra.mxu0 %v12943
  %v13085 = vpop.f32.mrf.mxu0
  %v13086 = vadd.f32 0.0, %v13085
  %v13087 = vpop.f32.mrf.mxu0
  %13088 = vdwg.mxu0
  %s13089 = scalar_lea.vmem %s13, 256
  %v13090 = vld [vmem:[%s13089] sm:$0xff]
  %v13091 = vld [vmem:[%s13089 + $0x8] sm:$0xff]
  %v13092 = vld [vmem:[%s13089 + $0x10] sm:$0xff]
  %v13093 = vld [vmem:[%s13089 + $0x18] sm:$0xff]
  %v13095 = vsel %vm458, %v13011, 0
  %v13098 = vsel %vm458, %v13016, 0
  %v13101 = vsel %vm458, %v13021, 0
  %v13104 = vsel %vm458, %v13026, 0
  %v13107 = vsel %vm458, %v13031, 0
  %v13110 = vsel %vm458, %v13036, 0
  %v13113 = vsel %vm458, %v13041, 0
  %v13116 = vsel %vm458, %v13046, 0
  %v13119 = vsel %vm458, %v13051, 0
  %v13122 = vsel %vm458, %v13056, 0
  %v13125 = vsel %vm458, %v13061, 0
  %v13128 = vsel %vm458, %v13066, 0
  %v13131 = vsel %vm458, %v13071, 0
  %v13134 = vsel %vm458, %v13076, 0
  %v13137 = vsel %vm458, %v13081, 0
  %v13140 = vsel %vm458, %v13086, 0
  %13142 = vmatprep.subr.mxu0 0.0
  %13143 = vmatpush1.msra.mxu0 0.0
  %13144 = vmatprep.subr.mxu0 0.0
  %13145 = vmatpush1.msra.mxu0 0.0
  %13146 = vmatprep.subr.mxu0 0.0
  %13147 = vmatpush1.msra.mxu0 0.0
  %13148 = vmatprep.subr.mxu0 0.0
  %13149 = vmatpush1.msra.mxu0 0.0
  %13150 = vmatprep.subr.mxu0 0.0
  %13151 = vmatpush1.msra.mxu0 0.0
  %13152 = vmatprep.subr.mxu0 0.0
  %13153 = vmatpush1.msra.mxu0 0.0
  %13154 = vmatprep.subr.mxu0 0.0
  %13155 = vmatpush1.msra.mxu0 0.0
  %13156 = vmatprep.subr.mxu0 0.0
  %13157 = vmatpush1.msra.mxu0 0.0
  %13158 = vmatprep.subr.mxu0 0.0
  %13159 = vmatpush1.msra.mxu0 0.0
  %13160 = vmatprep.subr.mxu0 0.0
  %13161 = vmatpush1.msra.mxu0 0.0
  %13162 = vmatprep.subr.mxu0 0.0
  %13163 = vmatpush1.msra.mxu0 0.0
  %13164 = vmatprep.subr.mxu0 0.0
  %13165 = vmatpush1.msra.mxu0 0.0
  %13166 = vmatprep.subr.mxu0 0.0
  %13167 = vmatpush1.msra.mxu0 %v13093
  %13168 = vmatprep.subr.mxu0 0.0
  %13169 = vmatpush1.msra.mxu0 %v13092
  %13170 = vmatprep.subr.mxu0 0.0
  %13171 = vmatpush1.msra.mxu0 %v13091
  %13172 = vmatprep.subr.mxu0 0.0
  %13173 = vmatpush1.msra.mxu0 %v13090
  %13174 = vmatprep.subr.mxu0 0.0
  %13175 = vmatpush2.msra.mxu0 0.0
  %13176 = vmatprep.subr.mxu0 0.0
  %13177 = vmatpush2.msra.mxu0 0.0
  %13178 = vmatprep.subr.mxu0 0.0
  %13179 = vmatpush2.msra.mxu0 0.0
  %13180 = vmatprep.subr.mxu0 0.0
  %13181 = vmatpush2.msra.mxu0 0.0
  %13182 = vmatprep.subr.mxu0 0.0
  %13183 = vmatpush2.msra.mxu0 0.0
  %13184 = vmatprep.subr.mxu0 0.0
  %13185 = vmatpush2.msra.mxu0 0.0
  %13186 = vmatprep.subr.mxu0 0.0
  %13187 = vmatpush2.msra.mxu0 0.0
  %13188 = vmatprep.subr.mxu0 0.0
  %13189 = vmatpush2.msra.mxu0 0.0
  %13190 = vmatprep.subr.mxu0 0.0
  %13191 = vmatpush2.msra.mxu0 0.0
  %13192 = vmatprep.subr.mxu0 0.0
  %13193 = vmatpush2.msra.mxu0 0.0
  %13194 = vmatprep.subr.mxu0 0.0
  %13195 = vmatpush2.msra.mxu0 0.0
  %13196 = vmatprep.subr.mxu0 0.0
  %13197 = vmatpush2.msra.mxu0 0.0
  %13198 = vmatprep.subr.mxu0 0.0
  %13199 = vmatpush2.msra.mxu0 0.0
  %13200 = vmatprep.subr.mxu0 0.0
  %13201 = vmatpush2.msra.mxu0 0.0
  %13202 = vmatprep.subr.mxu0 0.0
  %13203 = vmatpush2.msra.mxu0 0.0
  %13204 = vmatprep.subr.mxu0 0.0
  %13205 = vmatpush2.msra.mxu0 0.0
  %13206 = vmatprep.mubr.f32.mxu0 0.0
  %13207 = vmatmul.mubr.f32.gmra.mxu0 %v13095
  %v13208 = vpop.f32.mrf.mxu0
  %v13209 = vadd.f32 0.0, %v13208
  %v13210 = vpop.f32.mrf.mxu0
  %13211 = vmatprep.mubr.f32.mxu0 0.0
  %13212 = vmatmul.mubr.f32.gmra.mxu0 %v13098
  %v13213 = vpop.f32.mrf.mxu0
  %v13214 = vadd.f32 0.0, %v13213
  %v13215 = vpop.f32.mrf.mxu0
  %13216 = vmatprep.mubr.f32.mxu0 0.0
  %13217 = vmatmul.mubr.f32.gmra.mxu0 %v13101
  %v13218 = vpop.f32.mrf.mxu0
  %v13219 = vadd.f32 0.0, %v13218
  %v13220 = vpop.f32.mrf.mxu0
  %13221 = vmatprep.mubr.f32.mxu0 0.0
  %13222 = vmatmul.mubr.f32.gmra.mxu0 %v13104
  %v13223 = vpop.f32.mrf.mxu0
  %v13224 = vadd.f32 0.0, %v13223
  %v13225 = vpop.f32.mrf.mxu0
  %13226 = vmatprep.mubr.f32.mxu0 0.0
  %13227 = vmatmul.mubr.f32.gmra.mxu0 %v13107
  %v13228 = vpop.f32.mrf.mxu0
  %v13229 = vadd.f32 0.0, %v13228
  %v13230 = vpop.f32.mrf.mxu0
  %13231 = vmatprep.mubr.f32.mxu0 0.0
  %13232 = vmatmul.mubr.f32.gmra.mxu0 %v13110
  %v13233 = vpop.f32.mrf.mxu0
  %v13234 = vadd.f32 0.0, %v13233
  %v13235 = vpop.f32.mrf.mxu0
  %13236 = vmatprep.mubr.f32.mxu0 0.0
  %13237 = vmatmul.mubr.f32.gmra.mxu0 %v13113
  %v13238 = vpop.f32.mrf.mxu0
  %v13239 = vadd.f32 0.0, %v13238
  %v13240 = vpop.f32.mrf.mxu0
  %13241 = vmatprep.mubr.f32.mxu0 0.0
  %13242 = vmatmul.mubr.f32.gmra.mxu0 %v13116
  %v13243 = vpop.f32.mrf.mxu0
  %v13244 = vadd.f32 0.0, %v13243
  %v13245 = vpop.f32.mrf.mxu0
  %13246 = vmatprep.mubr.f32.mxu0 0.0
  %13247 = vmatmul.mubr.f32.gmra.mxu0 %v13119
  %v13248 = vpop.f32.mrf.mxu0
  %v13249 = vadd.f32 0.0, %v13248
  %v13250 = vpop.f32.mrf.mxu0
  %13251 = vmatprep.mubr.f32.mxu0 0.0
  %13252 = vmatmul.mubr.f32.gmra.mxu0 %v13122
  %v13253 = vpop.f32.mrf.mxu0
  %v13254 = vadd.f32 0.0, %v13253
  %v13255 = vpop.f32.mrf.mxu0
  %13256 = vmatprep.mubr.f32.mxu0 0.0
  %13257 = vmatmul.mubr.f32.gmra.mxu0 %v13125
  %v13258 = vpop.f32.mrf.mxu0
  %v13259 = vadd.f32 0.0, %v13258
  %v13260 = vpop.f32.mrf.mxu0
  %13261 = vmatprep.mubr.f32.mxu0 0.0
  %13262 = vmatmul.mubr.f32.gmra.mxu0 %v13128
  %v13263 = vpop.f32.mrf.mxu0
  %v13264 = vadd.f32 0.0, %v13263
  %v13265 = vpop.f32.mrf.mxu0
  %13266 = vmatprep.mubr.f32.mxu0 0.0
  %13267 = vmatmul.mubr.f32.gmra.mxu0 %v13131
  %v13268 = vpop.f32.mrf.mxu0
  %v13269 = vadd.f32 0.0, %v13268
  %v13270 = vpop.f32.mrf.mxu0
  %13271 = vmatprep.mubr.f32.mxu0 0.0
  %13272 = vmatmul.mubr.f32.gmra.mxu0 %v13134
  %v13273 = vpop.f32.mrf.mxu0
  %v13274 = vadd.f32 0.0, %v13273
  %v13275 = vpop.f32.mrf.mxu0
  %13276 = vmatprep.mubr.f32.mxu0 0.0
  %13277 = vmatmul.mubr.f32.gmra.mxu0 %v13137
  %v13278 = vpop.f32.mrf.mxu0
  %v13279 = vadd.f32 0.0, %v13278
  %v13280 = vpop.f32.mrf.mxu0
  %13281 = vmatprep.mubr.f32.mxu0 0.0
  %13282 = vmatmul.mubr.f32.gmra.mxu0 %v13140
  %v13283 = vpop.f32.mrf.mxu0
  %v13284 = vadd.f32 0.0, %v13283
  %v13285 = vpop.f32.mrf.mxu0
  %13286 = vdwg.mxu0
  %v13287 = vadd.f32 %v12911, %v13209
  %v13288 = vadd.f32 %v12912, %v13214
  %v13289 = vadd.f32 %v12913, %v13219
  %v13290 = vadd.f32 %v12914, %v13224
  %v13291 = vadd.f32 %v12915, %v13229
  %v13292 = vadd.f32 %v12916, %v13234
  %v13293 = vadd.f32 %v12917, %v13239
  %v13294 = vadd.f32 %v12918, %v13244
  %v13295 = vadd.f32 %v12919, %v13249
  %v13296 = vadd.f32 %v12920, %v13254
  %v13297 = vadd.f32 %v12921, %v13259
  %v13298 = vadd.f32 %v12922, %v13264
  %v13299 = vadd.f32 %v12923, %v13269
  %v13300 = vadd.f32 %v12924, %v13274
  %v13301 = vadd.f32 %v12925, %v13279
  %v13302 = vadd.f32 %v12926, %v13284
  %v13303 = vld [vmem:[%s14] sm:$0x1]
  %v13305 = vlaneseq
  %v13306 = vshrl.u32 %v13305, 7
  %v13307 = vsub.s32 0, %v13306
  %v13308 = vrot.slane %v13303, %v13307
  %v13310 = vadd.f32 %v13287, %v13308
  %v13311 = vadd.f32 %v13288, %v13308
  %v13312 = vadd.f32 %v13289, %v13308
  %v13313 = vadd.f32 %v13290, %v13308
  %v13314 = vadd.f32 %v13291, %v13308
  %v13315 = vadd.f32 %v13292, %v13308
  %v13316 = vadd.f32 %v13293, %v13308
  %v13317 = vadd.f32 %v13294, %v13308
  %v13318 = vadd.f32 %v13295, %v13308
  %v13319 = vadd.f32 %v13296, %v13308
  %v13320 = vadd.f32 %v13297, %v13308
  %v13321 = vadd.f32 %v13298, %v13308
  %v13322 = vadd.f32 %v13299, %v13308
  %v13323 = vadd.f32 %v13300, %v13308
  %v13324 = vadd.f32 %v13301, %v13308
  %v13325 = vadd.f32 %v13302, %v13308
  %13326 = vst [vmem:[%s15] sm:$0xff] %v13310
  %13327 = vst [vmem:[%s15 + $0x8] sm:$0xff] %v13311
  %13328 = vst [vmem:[%s15 + $0x10] sm:$0xff] %v13312
  %13329 = vst [vmem:[%s15 + $0x18] sm:$0xff] %v13313
  %13330 = vst [vmem:[%s15 + $0x20] sm:$0xff] %v13314
  %13331 = vst [vmem:[%s15 + $0x28] sm:$0xff] %v13315
  %13332 = vst [vmem:[%s15 + $0x30] sm:$0xff] %v13316
  %13333 = vst [vmem:[%s15 + $0x38] sm:$0xff] %v13317
  %13334 = vst [vmem:[%s15 + $0x40] sm:$0xff] %v13318
  %13335 = vst [vmem:[%s15 + $0x48] sm:$0xff] %v13319
  %13336 = vst [vmem:[%s15 + $0x50] sm:$0xff] %v13320
  %13337 = vst [vmem:[%s15 + $0x58] sm:$0xff] %v13321
  %13338 = vst [vmem:[%s15 + $0x60] sm:$0xff] %v13322
  %13339 = vst [vmem:[%s15 + $0x68] sm:$0xff] %v13323
  %13340 = vst [vmem:[%s15 + $0x70] sm:$0xff] %v13324
  %13341 = vst [vmem:[%s15 + $0x78] sm:$0xff] %v13325
  // Predicated region
  $region62: #{dada_forward.1} parent=0 // pred_check
    _
  $region63: #{dada_forward.1} parent=0 // pred_check_branch
    %13343 = sbr.rel (0) target = $region65
  $region64: #{dada_forward.1} parent=0 // pred_region
    _
  $region65: #{dada_forward.1} parent=0 // pred_fallthru
    _
  // Predicated region
  $region66: #{dada_forward.1} parent=0 // pred_check
    _
  $region67: #{dada_forward.1} parent=0 // pred_check_branch
    %13345 = sbr.rel (0) target = $region69
  $region68: #{dada_forward.1} parent=0 // pred_region
    _
  $region69: #{dada_forward.1} parent=0 // pred_fallthru
    _

</llo_original>
